<compile_context>
chip_gen: v7x
topology: tpu7x:2x2x1
jax: 0.10.0
libtpu: 0.0.40
codegen_flags: <defaults>
</compile_context>

<pallas_src>
import jax
import jax.numpy as jnp
import numpy as np
from jax.experimental import pallas as pl
from jax.experimental.pallas import tpu as pltpu

_EPS = 1e-5


def _meta_basic_block_kernel(x_ref, w1_ref, g1_ref, b1_ref,
                             w2_ref, g2_ref, b2_ref, out_ref, pad_scr):
    # x_ref   : (N, H, W, C)       VMEM, un-padded NHWC input
    # w*_ref  : (9, Cin, Cout)     VMEM, one (Cin, Cout) MXU operand per 3x3 tap
    # g*/b*   : (1, C)             VMEM, batch-norm affine params
    # out_ref : (N, H, W, Cout)    VMEM
    # pad_scr : (N, H+2, W+2, Cout) VMEM scratch, reused for both padded inputs
    N, H, W, C = x_ref.shape
    Cout = out_ref.shape[-1]
    P = N * H * W
    inv_p = 1.0 / float(P)

    # ---- zero only the 1-pixel halo of the padded scratch (once) ----
    zrow = jnp.zeros((N, 1, W + 2, Cout), jnp.float32)
    zcol = jnp.zeros((N, H + 2, 1, Cout), jnp.float32)
    pad_scr[:, 0:1, :, :] = zrow
    pad_scr[:, H + 1:H + 2, :, :] = zrow
    pad_scr[:, :, 0:1, :] = zcol
    pad_scr[:, :, W + 1:W + 2, :] = zcol

    def conv3x3(w_ref):
        # 3x3 conv as 9 MXU matmuls over the channel dimension.
        cin = w_ref.shape[1]
        cout = w_ref.shape[2]
        acc = jnp.zeros((P, cout), jnp.float32)
        for k in range(9):          # fixed 9-tap unroll (small, bounded)
            dy, dx = k // 3, k % 3
            patch = pad_scr[:, dy:dy + H, dx:dx + W, :].reshape(P, cin)
            acc = acc + jnp.dot(patch, w_ref[k],
                                preferred_element_type=jnp.float32)
        return acc

    def batchnorm(acc, g_ref, b_ref):
        # training-mode BN, per-channel batch stats (biased variance),
        # single fused reduction pass (sum + sum of squares).
        mean = jnp.sum(acc, axis=0, keepdims=True) * inv_p              # (1, C)
        msq = jnp.sum(acc * acc, axis=0, keepdims=True) * inv_p         # (1, C)
        var = msq - mean * mean
        scale = g_ref[...] * jax.lax.rsqrt(var + _EPS)                  # EUP rsqrt
        shift = b_ref[...] - mean * scale
        return acc * scale + shift

    # ---- conv1 -> bn1 -> relu ----
    pad_scr[:, 1:H + 1, 1:W + 1, :] = x_ref[...]        # in-kernel zero-pad
    y1 = jnp.maximum(batchnorm(conv3x3(w1_ref), g1_ref, b1_ref), 0.0)

    # reuse the same padded scratch (halo already zero) for conv2's input
    pad_scr[:, 1:H + 1, 1:W + 1, :] = y1.reshape(N, H, W, Cout)

    # ---- conv2 -> bn2 -> +residual -> relu ----
    y2 = batchnorm(conv3x3(w2_ref), g2_ref, b2_ref)
    residual = x_ref[...].reshape(P, C)
    out_ref[...] = jnp.maximum(y2 + residual, 0.0).reshape(N, H, W, Cout)


def meta_basic_block(x, w1, g1, b1, w2, g2, b2):
    """x: (N, C, H, W) float32 (PyTorch NCHW). Returns (N, C, H, W)."""
    N, C, H, W = x.shape
    Cout = w1.shape[0]
    assert w1.shape == (Cout, C, 3, 3) and w2.shape == (Cout, Cout, 3, 3)
    assert Cout == C, "identity residual requires inplanes == planes (downsample=None)"

    # single layout change NCHW -> NHWC so channels map to the lane axis
    x_nhwc = jnp.transpose(x.astype(jnp.float32), (0, 2, 3, 1))
    # (Cout, Cin, 3, 3) -> (9, Cin, Cout): one MXU weight operand per tap
    w1_t = jnp.transpose(w1.astype(jnp.float32), (2, 3, 1, 0)).reshape(9, C, Cout)
    w2_t = jnp.transpose(w2.astype(jnp.float32), (2, 3, 1, 0)).reshape(9, Cout, Cout)

    vmem = pl.BlockSpec(memory_space=pltpu.MemorySpace.VMEM)

    # scoped VMEM sized to the working set, with headroom (fits v5e/v6e/v7x)
    act_bytes = N * H * W * C * 4
    pad_bytes = N * (H + 2) * (W + 2) * Cout * 4
    w_bytes = 2 * 9 * C * Cout * 4
    vmem_limit = int(min(64 * 1024 * 1024,
                         max(8 * 1024 * 1024,
                             6 * (act_bytes + pad_bytes) + 4 * w_bytes)))

    out_nhwc = pl.pallas_call(
        _meta_basic_block_kernel,
        out_shape=jax.ShapeDtypeStruct((N, H, W, Cout), jnp.float32),
        in_specs=[vmem] * 7,
        out_specs=vmem,
        scratch_shapes=[pltpu.VMEM((N, H + 2, W + 2, Cout), jnp.float32)],
        compiler_params=pltpu.CompilerParams(vmem_limit_bytes=vmem_limit),
    )(x_nhwc, w1_t,
      g1.astype(jnp.float32).reshape(1, Cout), b1.astype(jnp.float32).reshape(1, Cout),
      w2_t,
      g2.astype(jnp.float32).reshape(1, Cout), b2.astype(jnp.float32).reshape(1, Cout))

    return jnp.transpose(out_nhwc, (0, 3, 1, 2))  # back to NCHW


def _reference(x, w1, g1, b1, w2, g2, b2):
    # plain-JAX reference matching the PyTorch forward (training-mode BN)
    def conv(a, w):
        return jax.lax.conv_general_dilated(
            a, w, window_strides=(1, 1), padding=((1, 1), (1, 1)),
            dimension_numbers=('NCHW', 'OIHW', 'NCHW'))

    def bn(a, g, b):
        m = jnp.mean(a, axis=(0, 2, 3), keepdims=True)
        v = jnp.mean((a - m) ** 2, axis=(0, 2, 3), keepdims=True)
        return (a - m) * jax.lax.rsqrt(v + _EPS) * g.reshape(1, -1, 1, 1) \
            + b.reshape(1, -1, 1, 1)

    out = jax.nn.relu(bn(conv(x, w1), g1, b1))
    out = bn(conv(out, w2), g2, b2) + x          # residual (downsample=None)
    return jax.nn.relu(out)                      # is_last=False -> out only


if __name__ == "__main__":
    # small shapes: batch=2, inplanes=planes=4, spatial=16x16, stride=1
    N, C, H, W = 2, 4, 16, 16
    key = jax.random.PRNGKey(0)
    kx, kw1, kw2, kg1, kb1, kg2, kb2 = jax.random.split(key, 7)

    x = jax.random.normal(kx, (N, C, H, W), dtype=jnp.float32)
    w1 = 0.3 * jax.random.normal(kw1, (C, C, 3, 3), dtype=jnp.float32)
    w2 = 0.3 * jax.random.normal(kw2, (C, C, 3, 3), dtype=jnp.float32)
    g1 = 1.0 + 0.1 * jax.random.normal(kg1, (C,), dtype=jnp.float32)
    b1 = 0.1 * jax.random.normal(kb1, (C,), dtype=jnp.float32)
    g2 = 1.0 + 0.1 * jax.random.normal(kg2, (C,), dtype=jnp.float32)
    b2 = 0.1 * jax.random.normal(kb2, (C,), dtype=jnp.float32)

    out = meta_basic_block(x, w1, g1, b1, w2, g2, b2)
    out = jax.block_until_ready(out)

    ref = jax.block_until_ready(_reference(x, w1, g1, b1, w2, g2, b2))
    np.testing.assert_allclose(np.asarray(out), np.asarray(ref), rtol=2e-3, atol=2e-3)

    print("KERNEL_OK")
</pallas_src>

<mosaic_0001>
module attributes {stable_mosaic.version = 11 : i64} {
  func.func @_meta_basic_block_kernel(%arg0: memref<2x16x16x4xf32, #tpu.memory_space<vmem>>, %arg1: memref<9x4x4xf32, #tpu.memory_space<vmem>>, %arg2: memref<1x4xf32, #tpu.memory_space<vmem>>, %arg3: memref<1x4xf32, #tpu.memory_space<vmem>>, %arg4: memref<9x4x4xf32, #tpu.memory_space<vmem>>, %arg5: memref<1x4xf32, #tpu.memory_space<vmem>>, %arg6: memref<1x4xf32, #tpu.memory_space<vmem>>, %arg7: memref<2x16x16x4xf32, #tpu.memory_space<vmem>>, %arg8: memref<2x18x18x4xf32, #tpu.memory_space<vmem>>) attributes {dimension_semantics = [], scalar_prefetch = 0 : i64, scratch_operands = 1 : i64, tpu.core_type = #tpu.core_type<tc>} {
    %cst = arith.constant 0.000000e+00 : f32
    %0 = vector.broadcast %cst : f32 to vector<2x1x18x4xf32>
    %cst_0 = arith.constant 0.000000e+00 : f32
    %1 = vector.broadcast %cst_0 : f32 to vector<2x18x1x4xf32>
    %c0 = arith.constant 0 : index
    %c0_1 = arith.constant 0 : index
    %c0_2 = arith.constant 0 : index
    %c0_3 = arith.constant 0 : index
    %2 = vector.load %arg8[%c0, %c0_1, %c0_2, %c0_3] : memref<2x18x18x4xf32, #tpu.memory_space<vmem>>, vector<2x1x18x4xf32>
    tpu.vector_store %arg8[%c0, %c0_1, %c0_2, %c0_3], %0 {strides = array<i32>} : memref<2x18x18x4xf32, #tpu.memory_space<vmem>>, vector<2x1x18x4xf32>,
    %c0_4 = arith.constant 0 : index
    %c17 = arith.constant 17 : index
    %c0_5 = arith.constant 0 : index
    %c0_6 = arith.constant 0 : index
    %3 = vector.load %arg8[%c0_4, %c17, %c0_5, %c0_6] : memref<2x18x18x4xf32, #tpu.memory_space<vmem>>, vector<2x1x18x4xf32>
    tpu.vector_store %arg8[%c0_4, %c17, %c0_5, %c0_6], %0 {strides = array<i32>} : memref<2x18x18x4xf32, #tpu.memory_space<vmem>>, vector<2x1x18x4xf32>,
    %c0_7 = arith.constant 0 : index
    %c0_8 = arith.constant 0 : index
    %c0_9 = arith.constant 0 : index
    %c0_10 = arith.constant 0 : index
    %4 = vector.load %arg8[%c0_7, %c0_8, %c0_9, %c0_10] : memref<2x18x18x4xf32, #tpu.memory_space<vmem>>, vector<2x18x1x4xf32>
    tpu.vector_store %arg8[%c0_7, %c0_8, %c0_9, %c0_10], %1 {strides = array<i32>} : memref<2x18x18x4xf32, #tpu.memory_space<vmem>>, vector<2x18x1x4xf32>,
    %c0_11 = arith.constant 0 : index
    %c0_12 = arith.constant 0 : index
    %c17_13 = arith.constant 17 : index
    %c0_14 = arith.constant 0 : index
    %5 = vector.load %arg8[%c0_11, %c0_12, %c17_13, %c0_14] : memref<2x18x18x4xf32, #tpu.memory_space<vmem>>, vector<2x18x1x4xf32>
    tpu.vector_store %arg8[%c0_11, %c0_12, %c17_13, %c0_14], %1 {strides = array<i32>} : memref<2x18x18x4xf32, #tpu.memory_space<vmem>>, vector<2x18x1x4xf32>,
    %c0_15 = arith.constant 0 : index
    %c0_16 = arith.constant 0 : index
    %c0_17 = arith.constant 0 : index
    %c0_18 = arith.constant 0 : index
    %6 = vector.load %arg0[%c0_15, %c0_16, %c0_17, %c0_18] : memref<2x16x16x4xf32, #tpu.memory_space<vmem>>, vector<2x16x16x4xf32>
    %c0_19 = arith.constant 0 : index
    %c1 = arith.constant 1 : index
    %c1_20 = arith.constant 1 : index
    %c0_21 = arith.constant 0 : index
    %7 = vector.load %arg8[%c0_19, %c1, %c1_20, %c0_21] : memref<2x18x18x4xf32, #tpu.memory_space<vmem>>, vector<2x16x16x4xf32>
    tpu.vector_store %arg8[%c0_19, %c1, %c1_20, %c0_21], %6 {strides = array<i32>} : memref<2x18x18x4xf32, #tpu.memory_space<vmem>>, vector<2x16x16x4xf32>,
    %cst_22 = arith.constant 0.000000e+00 : f32
    %8 = vector.broadcast %cst_22 : f32 to vector<512x4xf32>
    %c0_23 = arith.constant 0 : index
    %c0_24 = arith.constant 0 : index
    %c0_25 = arith.constant 0 : index
    %c0_26 = arith.constant 0 : index
    %9 = vector.load %arg8[%c0_23, %c0_24, %c0_25, %c0_26] : memref<2x18x18x4xf32, #tpu.memory_space<vmem>>, vector<2x16x16x4xf32>
    %10 = vector.shape_cast %9 : vector<2x16x16x4xf32> to vector<512x4xf32>
    %c0_27 = arith.constant 0 : index
    %c0_28 = arith.constant 0 : index
    %c0_29 = arith.constant 0 : index
    %11 = vector.load %arg1[%c0_27, %c0_28, %c0_29] : memref<9x4x4xf32, #tpu.memory_space<vmem>>, vector<1x4x4xf32>
    %12 = vector.shape_cast %11 : vector<1x4x4xf32> to vector<4x4xf32>
    %cst_30 = arith.constant dense<0.000000e+00> : vector<512x4xf32>
    %13 = tpu.matmul %10, %12, %cst_30 {dimension_numbers = #tpu.dot_dimension_numbers<[1], [0], [0], [1], [0, 0, 1, 1], [], []>} : vector<512x4xf32>, vector<4x4xf32>, vector<512x4xf32> -> vector<512x4xf32>
    %14 = arith.addf %8, %13 : vector<512x4xf32>
    %c0_31 = arith.constant 0 : index
    %c0_32 = arith.constant 0 : index
    %c1_33 = arith.constant 1 : index
    %c0_34 = arith.constant 0 : index
    %15 = vector.load %arg8[%c0_31, %c0_32, %c1_33, %c0_34] : memref<2x18x18x4xf32, #tpu.memory_space<vmem>>, vector<2x16x16x4xf32>
    %16 = vector.shape_cast %15 : vector<2x16x16x4xf32> to vector<512x4xf32>
    %c1_35 = arith.constant 1 : index
    %c0_36 = arith.constant 0 : index
    %c0_37 = arith.constant 0 : index
    %17 = vector.load %arg1[%c1_35, %c0_36, %c0_37] : memref<9x4x4xf32, #tpu.memory_space<vmem>>, vector<1x4x4xf32>
    %18 = vector.shape_cast %17 : vector<1x4x4xf32> to vector<4x4xf32>
    %cst_38 = arith.constant dense<0.000000e+00> : vector<512x4xf32>
    %19 = tpu.matmul %16, %18, %cst_38 {dimension_numbers = #tpu.dot_dimension_numbers<[1], [0], [0], [1], [0, 0, 1, 1], [], []>} : vector<512x4xf32>, vector<4x4xf32>, vector<512x4xf32> -> vector<512x4xf32>
    %20 = arith.addf %14, %19 : vector<512x4xf32>
    %c0_39 = arith.constant 0 : index
    %c0_40 = arith.constant 0 : index
    %c2 = arith.constant 2 : index
    %c0_41 = arith.constant 0 : index
    %21 = vector.load %arg8[%c0_39, %c0_40, %c2, %c0_41] : memref<2x18x18x4xf32, #tpu.memory_space<vmem>>, vector<2x16x16x4xf32>
    %22 = vector.shape_cast %21 : vector<2x16x16x4xf32> to vector<512x4xf32>
    %c2_42 = arith.constant 2 : index
    %c0_43 = arith.constant 0 : index
    %c0_44 = arith.constant 0 : index
    %23 = vector.load %arg1[%c2_42, %c0_43, %c0_44] : memref<9x4x4xf32, #tpu.memory_space<vmem>>, vector<1x4x4xf32>
    %24 = vector.shape_cast %23 : vector<1x4x4xf32> to vector<4x4xf32>
    %cst_45 = arith.constant dense<0.000000e+00> : vector<512x4xf32>
    %25 = tpu.matmul %22, %24, %cst_45 {dimension_numbers = #tpu.dot_dimension_numbers<[1], [0], [0], [1], [0, 0, 1, 1], [], []>} : vector<512x4xf32>, vector<4x4xf32>, vector<512x4xf32> -> vector<512x4xf32>
    %26 = arith.addf %20, %25 : vector<512x4xf32>
    %c0_46 = arith.constant 0 : index
    %c1_47 = arith.constant 1 : index
    %c0_48 = arith.constant 0 : index
    %c0_49 = arith.constant 0 : index
    %27 = vector.load %arg8[%c0_46, %c1_47, %c0_48, %c0_49] : memref<2x18x18x4xf32, #tpu.memory_space<vmem>>, vector<2x16x16x4xf32>
    %28 = vector.shape_cast %27 : vector<2x16x16x4xf32> to vector<512x4xf32>
    %c3 = arith.constant 3 : index
    %c0_50 = arith.constant 0 : index
    %c0_51 = arith.constant 0 : index
    %29 = vector.load %arg1[%c3, %c0_50, %c0_51] : memref<9x4x4xf32, #tpu.memory_space<vmem>>, vector<1x4x4xf32>
    %30 = vector.shape_cast %29 : vector<1x4x4xf32> to vector<4x4xf32>
    %cst_52 = arith.constant dense<0.000000e+00> : vector<512x4xf32>
    %31 = tpu.matmul %28, %30, %cst_52 {dimension_numbers = #tpu.dot_dimension_numbers<[1], [0], [0], [1], [0, 0, 1, 1], [], []>} : vector<512x4xf32>, vector<4x4xf32>, vector<512x4xf32> -> vector<512x4xf32>
    %32 = arith.addf %26, %31 : vector<512x4xf32>
    %c0_53 = arith.constant 0 : index
    %c1_54 = arith.constant 1 : index
    %c1_55 = arith.constant 1 : index
    %c0_56 = arith.constant 0 : index
    %33 = vector.load %arg8[%c0_53, %c1_54, %c1_55, %c0_56] : memref<2x18x18x4xf32, #tpu.memory_space<vmem>>, vector<2x16x16x4xf32>
    %34 = vector.shape_cast %33 : vector<2x16x16x4xf32> to vector<512x4xf32>
    %c4 = arith.constant 4 : index
    %c0_57 = arith.constant 0 : index
    %c0_58 = arith.constant 0 : index
    %35 = vector.load %arg1[%c4, %c0_57, %c0_58] : memref<9x4x4xf32, #tpu.memory_space<vmem>>, vector<1x4x4xf32>
    %36 = vector.shape_cast %35 : vector<1x4x4xf32> to vector<4x4xf32>
    %cst_59 = arith.constant dense<0.000000e+00> : vector<512x4xf32>
    %37 = tpu.matmul %34, %36, %cst_59 {dimension_numbers = #tpu.dot_dimension_numbers<[1], [0], [0], [1], [0, 0, 1, 1], [], []>} : vector<512x4xf32>, vector<4x4xf32>, vector<512x4xf32> -> vector<512x4xf32>
    %38 = arith.addf %32, %37 : vector<512x4xf32>
    %c0_60 = arith.constant 0 : index
    %c1_61 = arith.constant 1 : index
    %c2_62 = arith.constant 2 : index
    %c0_63 = arith.constant 0 : index
    %39 = vector.load %arg8[%c0_60, %c1_61, %c2_62, %c0_63] : memref<2x18x18x4xf32, #tpu.memory_space<vmem>>, vector<2x16x16x4xf32>
    %40 = vector.shape_cast %39 : vector<2x16x16x4xf32> to vector<512x4xf32>
    %c5 = arith.constant 5 : index
    %c0_64 = arith.constant 0 : index
    %c0_65 = arith.constant 0 : index
    %41 = vector.load %arg1[%c5, %c0_64, %c0_65] : memref<9x4x4xf32, #tpu.memory_space<vmem>>, vector<1x4x4xf32>
    %42 = vector.shape_cast %41 : vector<1x4x4xf32> to vector<4x4xf32>
    %cst_66 = arith.constant dense<0.000000e+00> : vector<512x4xf32>
    %43 = tpu.matmul %40, %42, %cst_66 {dimension_numbers = #tpu.dot_dimension_numbers<[1], [0], [0], [1], [0, 0, 1, 1], [], []>} : vector<512x4xf32>, vector<4x4xf32>, vector<512x4xf32> -> vector<512x4xf32>
    %44 = arith.addf %38, %43 : vector<512x4xf32>
    %c0_67 = arith.constant 0 : index
    %c2_68 = arith.constant 2 : index
    %c0_69 = arith.constant 0 : index
    %c0_70 = arith.constant 0 : index
    %45 = vector.load %arg8[%c0_67, %c2_68, %c0_69, %c0_70] : memref<2x18x18x4xf32, #tpu.memory_space<vmem>>, vector<2x16x16x4xf32>
    %46 = vector.shape_cast %45 : vector<2x16x16x4xf32> to vector<512x4xf32>
    %c6 = arith.constant 6 : index
    %c0_71 = arith.constant 0 : index
    %c0_72 = arith.constant 0 : index
    %47 = vector.load %arg1[%c6, %c0_71, %c0_72] : memref<9x4x4xf32, #tpu.memory_space<vmem>>, vector<1x4x4xf32>
    %48 = vector.shape_cast %47 : vector<1x4x4xf32> to vector<4x4xf32>
    %cst_73 = arith.constant dense<0.000000e+00> : vector<512x4xf32>
    %49 = tpu.matmul %46, %48, %cst_73 {dimension_numbers = #tpu.dot_dimension_numbers<[1], [0], [0], [1], [0, 0, 1, 1], [], []>} : vector<512x4xf32>, vector<4x4xf32>, vector<512x4xf32> -> vector<512x4xf32>
    %50 = arith.addf %44, %49 : vector<512x4xf32>
    %c0_74 = arith.constant 0 : index
    %c2_75 = arith.constant 2 : index
    %c1_76 = arith.constant 1 : index
    %c0_77 = arith.constant 0 : index
    %51 = vector.load %arg8[%c0_74, %c2_75, %c1_76, %c0_77] : memref<2x18x18x4xf32, #tpu.memory_space<vmem>>, vector<2x16x16x4xf32>
    %52 = vector.shape_cast %51 : vector<2x16x16x4xf32> to vector<512x4xf32>
    %c7 = arith.constant 7 : index
    %c0_78 = arith.constant 0 : index
    %c0_79 = arith.constant 0 : index
    %53 = vector.load %arg1[%c7, %c0_78, %c0_79] : memref<9x4x4xf32, #tpu.memory_space<vmem>>, vector<1x4x4xf32>
    %54 = vector.shape_cast %53 : vector<1x4x4xf32> to vector<4x4xf32>
    %cst_80 = arith.constant dense<0.000000e+00> : vector<512x4xf32>
    %55 = tpu.matmul %52, %54, %cst_80 {dimension_numbers = #tpu.dot_dimension_numbers<[1], [0], [0], [1], [0, 0, 1, 1], [], []>} : vector<512x4xf32>, vector<4x4xf32>, vector<512x4xf32> -> vector<512x4xf32>
    %56 = arith.addf %50, %55 : vector<512x4xf32>
    %c0_81 = arith.constant 0 : index
    %c2_82 = arith.constant 2 : index
    %c2_83 = arith.constant 2 : index
    %c0_84 = arith.constant 0 : index
    %57 = vector.load %arg8[%c0_81, %c2_82, %c2_83, %c0_84] : memref<2x18x18x4xf32, #tpu.memory_space<vmem>>, vector<2x16x16x4xf32>
    %58 = vector.shape_cast %57 : vector<2x16x16x4xf32> to vector<512x4xf32>
    %c8 = arith.constant 8 : index
    %c0_85 = arith.constant 0 : index
    %c0_86 = arith.constant 0 : index
    %59 = vector.load %arg1[%c8, %c0_85, %c0_86] : memref<9x4x4xf32, #tpu.memory_space<vmem>>, vector<1x4x4xf32>
    %60 = vector.shape_cast %59 : vector<1x4x4xf32> to vector<4x4xf32>
    %cst_87 = arith.constant dense<0.000000e+00> : vector<512x4xf32>
    %61 = tpu.matmul %58, %60, %cst_87 {dimension_numbers = #tpu.dot_dimension_numbers<[1], [0], [0], [1], [0, 0, 1, 1], [], []>} : vector<512x4xf32>, vector<4x4xf32>, vector<512x4xf32> -> vector<512x4xf32>
    %62 = arith.addf %56, %61 : vector<512x4xf32>
    %cst_88 = arith.constant dense<0.000000e+00> : vector<4xf32>
    %63 = vector.multi_reduction <add>, %62, %cst_88 [0] : vector<512x4xf32> to vector<4xf32>
    %64 = vector.shape_cast %63 : vector<4xf32> to vector<1x4xf32>
    %cst_89 = arith.constant 0.001953125 : f32
    %65 = vector.broadcast %cst_89 : f32 to vector<1x4xf32>
    %66 = arith.mulf %64, %65 : vector<1x4xf32>
    %67 = arith.mulf %62, %62 : vector<512x4xf32>
    %cst_90 = arith.constant dense<0.000000e+00> : vector<4xf32>
    %68 = vector.multi_reduction <add>, %67, %cst_90 [0] : vector<512x4xf32> to vector<4xf32>
    %69 = vector.shape_cast %68 : vector<4xf32> to vector<1x4xf32>
    %cst_91 = arith.constant 0.001953125 : f32
    %70 = vector.broadcast %cst_91 : f32 to vector<1x4xf32>
    %71 = arith.mulf %69, %70 : vector<1x4xf32>
    %72 = arith.mulf %66, %66 : vector<1x4xf32>
    %73 = arith.subf %71, %72 : vector<1x4xf32>
    %c0_92 = arith.constant 0 : index
    %c0_93 = arith.constant 0 : index
    %74 = vector.load %arg2[%c0_92, %c0_93] : memref<1x4xf32, #tpu.memory_space<vmem>>, vector<1x4xf32>
    %cst_94 = arith.constant 9.99999974E-6 : f32
    %75 = vector.broadcast %cst_94 : f32 to vector<1x4xf32>
    %76 = arith.addf %73, %75 : vector<1x4xf32>
    %77 = math.rsqrt %76 : vector<1x4xf32>
    %78 = arith.mulf %74, %77 : vector<1x4xf32>
    %c0_95 = arith.constant 0 : index
    %c0_96 = arith.constant 0 : index
    %79 = vector.load %arg3[%c0_95, %c0_96] : memref<1x4xf32, #tpu.memory_space<vmem>>, vector<1x4xf32>
    %80 = arith.mulf %66, %78 : vector<1x4xf32>
    %81 = arith.subf %79, %80 : vector<1x4xf32>
    %82 = vector.broadcast %78 : vector<1x4xf32> to vector<512x4xf32>
    %83 = arith.mulf %62, %82 : vector<512x4xf32>
    %84 = vector.broadcast %81 : vector<1x4xf32> to vector<512x4xf32>
    %85 = arith.addf %83, %84 : vector<512x4xf32>
    %cst_97 = arith.constant 0.000000e+00 : f32
    %86 = vector.broadcast %cst_97 : f32 to vector<512x4xf32>
    %87 = arith.maximumf %85, %86 : vector<512x4xf32>
    %88 = vector.shape_cast %87 : vector<512x4xf32> to vector<2x16x16x4xf32>
    %c0_98 = arith.constant 0 : index
    %c1_99 = arith.constant 1 : index
    %c1_100 = arith.constant 1 : index
    %c0_101 = arith.constant 0 : index
    %89 = vector.load %arg8[%c0_98, %c1_99, %c1_100, %c0_101] : memref<2x18x18x4xf32, #tpu.memory_space<vmem>>, vector<2x16x16x4xf32>
    tpu.vector_store %arg8[%c0_98, %c1_99, %c1_100, %c0_101], %88 {strides = array<i32>} : memref<2x18x18x4xf32, #tpu.memory_space<vmem>>, vector<2x16x16x4xf32>,
    %cst_102 = arith.constant 0.000000e+00 : f32
    %90 = vector.broadcast %cst_102 : f32 to vector<512x4xf32>
    %c0_103 = arith.constant 0 : index
    %c0_104 = arith.constant 0 : index
    %c0_105 = arith.constant 0 : index
    %c0_106 = arith.constant 0 : index
    %91 = vector.load %arg8[%c0_103, %c0_104, %c0_105, %c0_106] : memref<2x18x18x4xf32, #tpu.memory_space<vmem>>, vector<2x16x16x4xf32>
    %92 = vector.shape_cast %91 : vector<2x16x16x4xf32> to vector<512x4xf32>
    %c0_107 = arith.constant 0 : index
    %c0_108 = arith.constant 0 : index
    %c0_109 = arith.constant 0 : index
    %93 = vector.load %arg4[%c0_107, %c0_108, %c0_109] : memref<9x4x4xf32, #tpu.memory_space<vmem>>, vector<1x4x4xf32>
    %94 = vector.shape_cast %93 : vector<1x4x4xf32> to vector<4x4xf32>
    %cst_110 = arith.constant dense<0.000000e+00> : vector<512x4xf32>
    %95 = tpu.matmul %92, %94, %cst_110 {dimension_numbers = #tpu.dot_dimension_numbers<[1], [0], [0], [1], [0, 0, 1, 1], [], []>} : vector<512x4xf32>, vector<4x4xf32>, vector<512x4xf32> -> vector<512x4xf32>
    %96 = arith.addf %90, %95 : vector<512x4xf32>
    %c0_111 = arith.constant 0 : index
    %c0_112 = arith.constant 0 : index
    %c1_113 = arith.constant 1 : index
    %c0_114 = arith.constant 0 : index
    %97 = vector.load %arg8[%c0_111, %c0_112, %c1_113, %c0_114] : memref<2x18x18x4xf32, #tpu.memory_space<vmem>>, vector<2x16x16x4xf32>
    %98 = vector.shape_cast %97 : vector<2x16x16x4xf32> to vector<512x4xf32>
    %c1_115 = arith.constant 1 : index
    %c0_116 = arith.constant 0 : index
    %c0_117 = arith.constant 0 : index
    %99 = vector.load %arg4[%c1_115, %c0_116, %c0_117] : memref<9x4x4xf32, #tpu.memory_space<vmem>>, vector<1x4x4xf32>
    %100 = vector.shape_cast %99 : vector<1x4x4xf32> to vector<4x4xf32>
    %cst_118 = arith.constant dense<0.000000e+00> : vector<512x4xf32>
    %101 = tpu.matmul %98, %100, %cst_118 {dimension_numbers = #tpu.dot_dimension_numbers<[1], [0], [0], [1], [0, 0, 1, 1], [], []>} : vector<512x4xf32>, vector<4x4xf32>, vector<512x4xf32> -> vector<512x4xf32>
    %102 = arith.addf %96, %101 : vector<512x4xf32>
    %c0_119 = arith.constant 0 : index
    %c0_120 = arith.constant 0 : index
    %c2_121 = arith.constant 2 : index
    %c0_122 = arith.constant 0 : index
    %103 = vector.load %arg8[%c0_119, %c0_120, %c2_121, %c0_122] : memref<2x18x18x4xf32, #tpu.memory_space<vmem>>, vector<2x16x16x4xf32>
    %104 = vector.shape_cast %103 : vector<2x16x16x4xf32> to vector<512x4xf32>
    %c2_123 = arith.constant 2 : index
    %c0_124 = arith.constant 0 : index
    %c0_125 = arith.constant 0 : index
    %105 = vector.load %arg4[%c2_123, %c0_124, %c0_125] : memref<9x4x4xf32, #tpu.memory_space<vmem>>, vector<1x4x4xf32>
    %106 = vector.shape_cast %105 : vector<1x4x4xf32> to vector<4x4xf32>
    %cst_126 = arith.constant dense<0.000000e+00> : vector<512x4xf32>
    %107 = tpu.matmul %104, %106, %cst_126 {dimension_numbers = #tpu.dot_dimension_numbers<[1], [0], [0], [1], [0, 0, 1, 1], [], []>} : vector<512x4xf32>, vector<4x4xf32>, vector<512x4xf32> -> vector<512x4xf32>
    %108 = arith.addf %102, %107 : vector<512x4xf32>
    %c0_127 = arith.constant 0 : index
    %c1_128 = arith.constant 1 : index
    %c0_129 = arith.constant 0 : index
    %c0_130 = arith.constant 0 : index
    %109 = vector.load %arg8[%c0_127, %c1_128, %c0_129, %c0_130] : memref<2x18x18x4xf32, #tpu.memory_space<vmem>>, vector<2x16x16x4xf32>
    %110 = vector.shape_cast %109 : vector<2x16x16x4xf32> to vector<512x4xf32>
    %c3_131 = arith.constant 3 : index
    %c0_132 = arith.constant 0 : index
    %c0_133 = arith.constant 0 : index
    %111 = vector.load %arg4[%c3_131, %c0_132, %c0_133] : memref<9x4x4xf32, #tpu.memory_space<vmem>>, vector<1x4x4xf32>
    %112 = vector.shape_cast %111 : vector<1x4x4xf32> to vector<4x4xf32>
    %cst_134 = arith.constant dense<0.000000e+00> : vector<512x4xf32>
    %113 = tpu.matmul %110, %112, %cst_134 {dimension_numbers = #tpu.dot_dimension_numbers<[1], [0], [0], [1], [0, 0, 1, 1], [], []>} : vector<512x4xf32>, vector<4x4xf32>, vector<512x4xf32> -> vector<512x4xf32>
    %114 = arith.addf %108, %113 : vector<512x4xf32>
    %c0_135 = arith.constant 0 : index
    %c1_136 = arith.constant 1 : index
    %c1_137 = arith.constant 1 : index
    %c0_138 = arith.constant 0 : index
    %115 = vector.load %arg8[%c0_135, %c1_136, %c1_137, %c0_138] : memref<2x18x18x4xf32, #tpu.memory_space<vmem>>, vector<2x16x16x4xf32>
    %116 = vector.shape_cast %115 : vector<2x16x16x4xf32> to vector<512x4xf32>
    %c4_139 = arith.constant 4 : index
    %c0_140 = arith.constant 0 : index
    %c0_141 = arith.constant 0 : index
    %117 = vector.load %arg4[%c4_139, %c0_140, %c0_141] : memref<9x4x4xf32, #tpu.memory_space<vmem>>, vector<1x4x4xf32>
    %118 = vector.shape_cast %117 : vector<1x4x4xf32> to vector<4x4xf32>
    %cst_142 = arith.constant dense<0.000000e+00> : vector<512x4xf32>
    %119 = tpu.matmul %116, %118, %cst_142 {dimension_numbers = #tpu.dot_dimension_numbers<[1], [0], [0], [1], [0, 0, 1, 1], [], []>} : vector<512x4xf32>, vector<4x4xf32>, vector<512x4xf32> -> vector<512x4xf32>
    %120 = arith.addf %114, %119 : vector<512x4xf32>
    %c0_143 = arith.constant 0 : index
    %c1_144 = arith.constant 1 : index
    %c2_145 = arith.constant 2 : index
    %c0_146 = arith.constant 0 : index
    %121 = vector.load %arg8[%c0_143, %c1_144, %c2_145, %c0_146] : memref<2x18x18x4xf32, #tpu.memory_space<vmem>>, vector<2x16x16x4xf32>
    %122 = vector.shape_cast %121 : vector<2x16x16x4xf32> to vector<512x4xf32>
    %c5_147 = arith.constant 5 : index
    %c0_148 = arith.constant 0 : index
    %c0_149 = arith.constant 0 : index
    %123 = vector.load %arg4[%c5_147, %c0_148, %c0_149] : memref<9x4x4xf32, #tpu.memory_space<vmem>>, vector<1x4x4xf32>
    %124 = vector.shape_cast %123 : vector<1x4x4xf32> to vector<4x4xf32>
    %cst_150 = arith.constant dense<0.000000e+00> : vector<512x4xf32>
    %125 = tpu.matmul %122, %124, %cst_150 {dimension_numbers = #tpu.dot_dimension_numbers<[1], [0], [0], [1], [0, 0, 1, 1], [], []>} : vector<512x4xf32>, vector<4x4xf32>, vector<512x4xf32> -> vector<512x4xf32>
    %126 = arith.addf %120, %125 : vector<512x4xf32>
    %c0_151 = arith.constant 0 : index
    %c2_152 = arith.constant 2 : index
    %c0_153 = arith.constant 0 : index
    %c0_154 = arith.constant 0 : index
    %127 = vector.load %arg8[%c0_151, %c2_152, %c0_153, %c0_154] : memref<2x18x18x4xf32, #tpu.memory_space<vmem>>, vector<2x16x16x4xf32>
    %128 = vector.shape_cast %127 : vector<2x16x16x4xf32> to vector<512x4xf32>
    %c6_155 = arith.constant 6 : index
    %c0_156 = arith.constant 0 : index
    %c0_157 = arith.constant 0 : index
    %129 = vector.load %arg4[%c6_155, %c0_156, %c0_157] : memref<9x4x4xf32, #tpu.memory_space<vmem>>, vector<1x4x4xf32>
    %130 = vector.shape_cast %129 : vector<1x4x4xf32> to vector<4x4xf32>
    %cst_158 = arith.constant dense<0.000000e+00> : vector<512x4xf32>
    %131 = tpu.matmul %128, %130, %cst_158 {dimension_numbers = #tpu.dot_dimension_numbers<[1], [0], [0], [1], [0, 0, 1, 1], [], []>} : vector<512x4xf32>, vector<4x4xf32>, vector<512x4xf32> -> vector<512x4xf32>
    %132 = arith.addf %126, %131 : vector<512x4xf32>
    %c0_159 = arith.constant 0 : index
    %c2_160 = arith.constant 2 : index
    %c1_161 = arith.constant 1 : index
    %c0_162 = arith.constant 0 : index
    %133 = vector.load %arg8[%c0_159, %c2_160, %c1_161, %c0_162] : memref<2x18x18x4xf32, #tpu.memory_space<vmem>>, vector<2x16x16x4xf32>
    %134 = vector.shape_cast %133 : vector<2x16x16x4xf32> to vector<512x4xf32>
    %c7_163 = arith.constant 7 : index
    %c0_164 = arith.constant 0 : index
    %c0_165 = arith.constant 0 : index
    %135 = vector.load %arg4[%c7_163, %c0_164, %c0_165] : memref<9x4x4xf32, #tpu.memory_space<vmem>>, vector<1x4x4xf32>
    %136 = vector.shape_cast %135 : vector<1x4x4xf32> to vector<4x4xf32>
    %cst_166 = arith.constant dense<0.000000e+00> : vector<512x4xf32>
    %137 = tpu.matmul %134, %136, %cst_166 {dimension_numbers = #tpu.dot_dimension_numbers<[1], [0], [0], [1], [0, 0, 1, 1], [], []>} : vector<512x4xf32>, vector<4x4xf32>, vector<512x4xf32> -> vector<512x4xf32>
    %138 = arith.addf %132, %137 : vector<512x4xf32>
    %c0_167 = arith.constant 0 : index
    %c2_168 = arith.constant 2 : index
    %c2_169 = arith.constant 2 : index
    %c0_170 = arith.constant 0 : index
    %139 = vector.load %arg8[%c0_167, %c2_168, %c2_169, %c0_170] : memref<2x18x18x4xf32, #tpu.memory_space<vmem>>, vector<2x16x16x4xf32>
    %140 = vector.shape_cast %139 : vector<2x16x16x4xf32> to vector<512x4xf32>
    %c8_171 = arith.constant 8 : index
    %c0_172 = arith.constant 0 : index
    %c0_173 = arith.constant 0 : index
    %141 = vector.load %arg4[%c8_171, %c0_172, %c0_173] : memref<9x4x4xf32, #tpu.memory_space<vmem>>, vector<1x4x4xf32>
    %142 = vector.shape_cast %141 : vector<1x4x4xf32> to vector<4x4xf32>
    %cst_174 = arith.constant dense<0.000000e+00> : vector<512x4xf32>
    %143 = tpu.matmul %140, %142, %cst_174 {dimension_numbers = #tpu.dot_dimension_numbers<[1], [0], [0], [1], [0, 0, 1, 1], [], []>} : vector<512x4xf32>, vector<4x4xf32>, vector<512x4xf32> -> vector<512x4xf32>
    %144 = arith.addf %138, %143 : vector<512x4xf32>
    %cst_175 = arith.constant dense<0.000000e+00> : vector<4xf32>
    %145 = vector.multi_reduction <add>, %144, %cst_175 [0] : vector<512x4xf32> to vector<4xf32>
    %146 = vector.shape_cast %145 : vector<4xf32> to vector<1x4xf32>
    %cst_176 = arith.constant 0.001953125 : f32
    %147 = vector.broadcast %cst_176 : f32 to vector<1x4xf32>
    %148 = arith.mulf %146, %147 : vector<1x4xf32>
    %149 = arith.mulf %144, %144 : vector<512x4xf32>
    %cst_177 = arith.constant dense<0.000000e+00> : vector<4xf32>
    %150 = vector.multi_reduction <add>, %149, %cst_177 [0] : vector<512x4xf32> to vector<4xf32>
    %151 = vector.shape_cast %150 : vector<4xf32> to vector<1x4xf32>
    %cst_178 = arith.constant 0.001953125 : f32
    %152 = vector.broadcast %cst_178 : f32 to vector<1x4xf32>
    %153 = arith.mulf %151, %152 : vector<1x4xf32>
    %154 = arith.mulf %148, %148 : vector<1x4xf32>
    %155 = arith.subf %153, %154 : vector<1x4xf32>
    %c0_179 = arith.constant 0 : index
    %c0_180 = arith.constant 0 : index
    %156 = vector.load %arg5[%c0_179, %c0_180] : memref<1x4xf32, #tpu.memory_space<vmem>>, vector<1x4xf32>
    %cst_181 = arith.constant 9.99999974E-6 : f32
    %157 = vector.broadcast %cst_181 : f32 to vector<1x4xf32>
    %158 = arith.addf %155, %157 : vector<1x4xf32>
    %159 = math.rsqrt %158 : vector<1x4xf32>
    %160 = arith.mulf %156, %159 : vector<1x4xf32>
    %c0_182 = arith.constant 0 : index
    %c0_183 = arith.constant 0 : index
    %161 = vector.load %arg6[%c0_182, %c0_183] : memref<1x4xf32, #tpu.memory_space<vmem>>, vector<1x4xf32>
    %162 = arith.mulf %148, %160 : vector<1x4xf32>
    %163 = arith.subf %161, %162 : vector<1x4xf32>
    %164 = vector.broadcast %160 : vector<1x4xf32> to vector<512x4xf32>
    %165 = arith.mulf %144, %164 : vector<512x4xf32>
    %166 = vector.broadcast %163 : vector<1x4xf32> to vector<512x4xf32>
    %167 = arith.addf %165, %166 : vector<512x4xf32>
    %c0_184 = arith.constant 0 : index
    %c0_185 = arith.constant 0 : index
    %c0_186 = arith.constant 0 : index
    %c0_187 = arith.constant 0 : index
    %168 = vector.load %arg0[%c0_184, %c0_185, %c0_186, %c0_187] : memref<2x16x16x4xf32, #tpu.memory_space<vmem>>, vector<2x16x16x4xf32>
    %169 = vector.shape_cast %168 : vector<2x16x16x4xf32> to vector<512x4xf32>
    %170 = arith.addf %167, %169 : vector<512x4xf32>
    %cst_188 = arith.constant 0.000000e+00 : f32
    %171 = vector.broadcast %cst_188 : f32 to vector<512x4xf32>
    %172 = arith.maximumf %170, %171 : vector<512x4xf32>
    %173 = vector.shape_cast %172 : vector<512x4xf32> to vector<2x16x16x4xf32>
    %c0_189 = arith.constant 0 : index
    %c0_190 = arith.constant 0 : index
    %c0_191 = arith.constant 0 : index
    %c0_192 = arith.constant 0 : index
    %174 = vector.load %arg7[%c0_189, %c0_190, %c0_191, %c0_192] : memref<2x16x16x4xf32, #tpu.memory_space<vmem>>, vector<2x16x16x4xf32>
    tpu.vector_store %arg7[%c0_189, %c0_190, %c0_191, %c0_192], %173 {strides = array<i32>} : memref<2x16x16x4xf32, #tpu.memory_space<vmem>>, vector<2x16x16x4xf32>,
    return
  }
}

</mosaic_0001>

<llo_original>
// kernel: tpu_custom_call.1
$region0: #{tpu_custom_call.1}
  #allocation0 [shape = 'u32[]', space=smem, size = 0x4, offset = 0x4, fixed_abs, tag = 'smem constant byte address 0x4 - core index']
  #allocation1 [shape = 'u32[144,128]{1,0:T(1,128)}', space=vmem, size = 0x12000, scoped, tag = 'internal scratch']
  #allocation2 [shape = 'f32[2,18,18,4]{3,2,1,0:T(8,128)}', space=vmem, size = 0x6c000, scoped, tag = 'scratch operand']
  %s0 = inlined_call_operand.vmem [shape: f32[2,16,16,4], index: 0, kind: input, shape index: {}]
  %s1 = inlined_call_operand.vmem [shape: f32[9,4,4], index: 1, kind: input, shape index: {}]
  %s2 = inlined_call_operand.vmem [shape: f32[1,4], index: 2, kind: input, shape index: {}]
  %s3 = inlined_call_operand.vmem [shape: f32[1,4], index: 3, kind: input, shape index: {}]
  %s4 = inlined_call_operand.vmem [shape: f32[9,4,4], index: 4, kind: input, shape index: {}]
  %s5 = inlined_call_operand.vmem [shape: f32[1,4], index: 5, kind: input, shape index: {}]
  %s6 = inlined_call_operand.vmem [shape: f32[1,4], index: 6, kind: input, shape index: {}]
  %s7 = inlined_call_operand.vmem [shape: f32[2,16,16,4], index: 7, kind: output, shape index: {}]
  %s8 = sld [smem:[#allocation0]]
  $region38: #{tpu_custom_call.1} parent=0
    _
  %s10 = ssub.s32 1, %s8
  %s11 = scalar_select 0, %s10, %s8
  // Predicated region
  $region2: #{tpu_custom_call.1} parent=0 // pred_check
    _
  $region3: #{tpu_custom_call.1} parent=0 // pred_check_branch
    %13 = sbr.rel (0) target = $region5
  $region4: #{tpu_custom_call.1} parent=0 // pred_region
    _
  $region5: #{tpu_custom_call.1} parent=0 // pred_fallthru
    _
  // Predicated region
  $region6: #{tpu_custom_call.1} parent=0 // pred_check
    _
  $region7: #{tpu_custom_call.1} parent=0 // pred_check_branch
    %15 = sbr.rel (0) target = $region9
  $region8: #{tpu_custom_call.1} parent=0 // pred_region
    _
  $region9: #{tpu_custom_call.1} parent=0 // pred_fallthru
    _
  // Predicated region
  $region10: #{tpu_custom_call.1} parent=0 // pred_check
    _
  $region11: #{tpu_custom_call.1} parent=0 // pred_check_branch
    %17 = sbr.rel (0) target = $region13
  $region12: #{tpu_custom_call.1} parent=0 // pred_region
    _
  $region13: #{tpu_custom_call.1} parent=0 // pred_fallthru
    _
  // Predicated region
  $region14: #{tpu_custom_call.1} parent=0 // pred_check
    _
  $region15: #{tpu_custom_call.1} parent=0 // pred_check_branch
    %19 = sbr.rel (0) target = $region17
  $region16: #{tpu_custom_call.1} parent=0 // pred_region
    _
  $region17: #{tpu_custom_call.1} parent=0 // pred_fallthru
    _
  // Predicated region
  $region18: #{tpu_custom_call.1} parent=0 // pred_check
    _
  $region19: #{tpu_custom_call.1} parent=0 // pred_check_branch
    %21 = sbr.rel (0) target = $region21
  $region20: #{tpu_custom_call.1} parent=0 // pred_region
    _
  $region21: #{tpu_custom_call.1} parent=0 // pred_fallthru
    _
  // Predicated region
  $region22: #{tpu_custom_call.1} parent=0 // pred_check
    _
  $region23: #{tpu_custom_call.1} parent=0 // pred_check_branch
    %23 = sbr.rel (0) target = $region25
  $region24: #{tpu_custom_call.1} parent=0 // pred_region
    _
  $region25: #{tpu_custom_call.1} parent=0 // pred_fallthru
    _
  // Predicated region
  $region26: #{tpu_custom_call.1} parent=0 // pred_check
    _
  $region27: #{tpu_custom_call.1} parent=0 // pred_check_branch
    %25 = sbr.rel (0) target = $region29
  $region28: #{tpu_custom_call.1} parent=0 // pred_region
    _
  $region29: #{tpu_custom_call.1} parent=0 // pred_fallthru
    _
  %vm26 = vcmask 31744
  %27 = vst.msk [vmem:[#allocation2] sm:$0xff] %vm26, 0.0
  %28 = vst.msk [vmem:[#allocation2 + $0x8] sm:$0xff] %vm26, 0.0
  %vm29 = vcmask 25600
  %30 = vst.msk [vmem:[#allocation2 + $0x10] sm:$0x3] %vm29, 0.0
  %31 = vst.msk [vmem:[#allocation2 + $0x1b0] sm:$0xff] %vm26, 0.0
  %32 = vst.msk [vmem:[#allocation2 + $0x1b8] sm:$0xff] %vm26, 0.0
  %33 = vst.msk [vmem:[#allocation2 + $0x1c0] sm:$0x3] %vm29, 0.0
  %s34 = scalar_lea.vmem [#allocation2], 408
  %35 = vst.msk [vmem:[%s34] sm:$0xff] %vm26, 0.0
  %36 = vst.msk [vmem:[%s34 + $0x8] sm:$0xff] %vm26, 0.0
  %37 = vst.msk [vmem:[%s34 + $0x10] sm:$0x3] %vm29, 0.0
  %38 = vst.msk [vmem:[%s34 + $0x1b0] sm:$0xff] %vm26, 0.0
  %39 = vst.msk [vmem:[%s34 + $0x1b8] sm:$0xff] %vm26, 0.0
  %40 = vst.msk [vmem:[%s34 + $0x1c0] sm:$0x3] %vm29, 0.0
  %vm41 = vcmask 24576
  %42 = vst.msk [vmem:[#allocation2] sm:$0x1] %vm41, 0.0
  %43 = vst.msk [vmem:[#allocation2 + $0x18] sm:$0x1] %vm41, 0.0
  %44 = vst.msk [vmem:[#allocation2 + $0x30] sm:$0x1] %vm41, 0.0
  %45 = vst.msk [vmem:[#allocation2 + $0x48] sm:$0x1] %vm41, 0.0
  %46 = vst.msk [vmem:[#allocation2 + $0x60] sm:$0x1] %vm41, 0.0
  %47 = vst.msk [vmem:[#allocation2 + $0x78] sm:$0x1] %vm41, 0.0
  %48 = vst.msk [vmem:[#allocation2 + $0x90] sm:$0x1] %vm41, 0.0
  %49 = vst.msk [vmem:[#allocation2 + $0xa8] sm:$0x1] %vm41, 0.0
  %50 = vst.msk [vmem:[#allocation2 + $0xc0] sm:$0x1] %vm41, 0.0
  %51 = vst.msk [vmem:[#allocation2 + $0xd8] sm:$0x1] %vm41, 0.0
  %52 = vst.msk [vmem:[#allocation2 + $0xf0] sm:$0x1] %vm41, 0.0
  %53 = vst.msk [vmem:[#allocation2 + $0x108] sm:$0x1] %vm41, 0.0
  %54 = vst.msk [vmem:[#allocation2 + $0x120] sm:$0x1] %vm41, 0.0
  %55 = vst.msk [vmem:[#allocation2 + $0x138] sm:$0x1] %vm41, 0.0
  %56 = vst.msk [vmem:[#allocation2 + $0x150] sm:$0x1] %vm41, 0.0
  %57 = vst.msk [vmem:[#allocation2 + $0x168] sm:$0x1] %vm41, 0.0
  %58 = vst.msk [vmem:[#allocation2 + $0x180] sm:$0x1] %vm41, 0.0
  %59 = vst.msk [vmem:[#allocation2 + $0x198] sm:$0x1] %vm41, 0.0
  %60 = vst.msk [vmem:[#allocation2 + $0x1b0] sm:$0x1] %vm41, 0.0
  %61 = vst.msk [vmem:[#allocation2 + $0x1c8] sm:$0x1] %vm41, 0.0
  %62 = vst.msk [vmem:[#allocation2 + $0x1e0] sm:$0x1] %vm41, 0.0
  %63 = vst.msk [vmem:[#allocation2 + $0x1f8] sm:$0x1] %vm41, 0.0
  %64 = vst.msk [vmem:[#allocation2 + $0x210] sm:$0x1] %vm41, 0.0
  %65 = vst.msk [vmem:[#allocation2 + $0x228] sm:$0x1] %vm41, 0.0
  %66 = vst.msk [vmem:[#allocation2 + $0x240] sm:$0x1] %vm41, 0.0
  %67 = vst.msk [vmem:[#allocation2 + $0x258] sm:$0x1] %vm41, 0.0
  %68 = vst.msk [vmem:[#allocation2 + $0x270] sm:$0x1] %vm41, 0.0
  %69 = vst.msk [vmem:[#allocation2 + $0x288] sm:$0x1] %vm41, 0.0
  %70 = vst.msk [vmem:[#allocation2 + $0x2a0] sm:$0x1] %vm41, 0.0
  %71 = vst.msk [vmem:[#allocation2 + $0x2b8] sm:$0x1] %vm41, 0.0
  %72 = vst.msk [vmem:[#allocation2 + $0x2d0] sm:$0x1] %vm41, 0.0
  %73 = vst.msk [vmem:[#allocation2 + $0x2e8] sm:$0x1] %vm41, 0.0
  %74 = vst.msk [vmem:[#allocation2 + $0x300] sm:$0x1] %vm41, 0.0
  %75 = vst.msk [vmem:[#allocation2 + $0x318] sm:$0x1] %vm41, 0.0
  %76 = vst.msk [vmem:[#allocation2 + $0x330] sm:$0x1] %vm41, 0.0
  %77 = vst.msk [vmem:[#allocation2 + $0x348] sm:$0x1] %vm41, 0.0
  %78 = vst.msk [vmem:[#allocation2 + $0x11] sm:$0x1] %vm41, 0.0
  %79 = vst.msk [vmem:[#allocation2 + $0x29] sm:$0x1] %vm41, 0.0
  %80 = vst.msk [vmem:[#allocation2 + $0x41] sm:$0x1] %vm41, 0.0
  %81 = vst.msk [vmem:[#allocation2 + $0x59] sm:$0x1] %vm41, 0.0
  %82 = vst.msk [vmem:[#allocation2 + $0x71] sm:$0x1] %vm41, 0.0
  %83 = vst.msk [vmem:[#allocation2 + $0x89] sm:$0x1] %vm41, 0.0
  %84 = vst.msk [vmem:[#allocation2 + $0xa1] sm:$0x1] %vm41, 0.0
  %85 = vst.msk [vmem:[#allocation2 + $0xb9] sm:$0x1] %vm41, 0.0
  %86 = vst.msk [vmem:[#allocation2 + $0xd1] sm:$0x1] %vm41, 0.0
  %87 = vst.msk [vmem:[#allocation2 + $0xe9] sm:$0x1] %vm41, 0.0
  %88 = vst.msk [vmem:[#allocation2 + $0x101] sm:$0x1] %vm41, 0.0
  %89 = vst.msk [vmem:[#allocation2 + $0x119] sm:$0x1] %vm41, 0.0
  %90 = vst.msk [vmem:[#allocation2 + $0x131] sm:$0x1] %vm41, 0.0
  %91 = vst.msk [vmem:[#allocation2 + $0x149] sm:$0x1] %vm41, 0.0
  %92 = vst.msk [vmem:[#allocation2 + $0x161] sm:$0x1] %vm41, 0.0
  %93 = vst.msk [vmem:[#allocation2 + $0x179] sm:$0x1] %vm41, 0.0
  %94 = vst.msk [vmem:[#allocation2 + $0x191] sm:$0x1] %vm41, 0.0
  %95 = vst.msk [vmem:[#allocation2 + $0x1a9] sm:$0x1] %vm41, 0.0
  %96 = vst.msk [vmem:[#allocation2 + $0x1c1] sm:$0x1] %vm41, 0.0
  %97 = vst.msk [vmem:[#allocation2 + $0x1d9] sm:$0x1] %vm41, 0.0
  %98 = vst.msk [vmem:[#allocation2 + $0x1f1] sm:$0x1] %vm41, 0.0
  %99 = vst.msk [vmem:[#allocation2 + $0x209] sm:$0x1] %vm41, 0.0
  %100 = vst.msk [vmem:[#allocation2 + $0x221] sm:$0x1] %vm41, 0.0
  %101 = vst.msk [vmem:[#allocation2 + $0x239] sm:$0x1] %vm41, 0.0
  %102 = vst.msk [vmem:[#allocation2 + $0x251] sm:$0x1] %vm41, 0.0
  %103 = vst.msk [vmem:[#allocation2 + $0x269] sm:$0x1] %vm41, 0.0
  %104 = vst.msk [vmem:[#allocation2 + $0x281] sm:$0x1] %vm41, 0.0
  %105 = vst.msk [vmem:[#allocation2 + $0x299] sm:$0x1] %vm41, 0.0
  %106 = vst.msk [vmem:[#allocation2 + $0x2b1] sm:$0x1] %vm41, 0.0
  %107 = vst.msk [vmem:[#allocation2 + $0x2c9] sm:$0x1] %vm41, 0.0
  %108 = vst.msk [vmem:[#allocation2 + $0x2e1] sm:$0x1] %vm41, 0.0
  %109 = vst.msk [vmem:[#allocation2 + $0x2f9] sm:$0x1] %vm41, 0.0
  %110 = vst.msk [vmem:[#allocation2 + $0x311] sm:$0x1] %vm41, 0.0
  %111 = vst.msk [vmem:[#allocation2 + $0x329] sm:$0x1] %vm41, 0.0
  %112 = vst.msk [vmem:[#allocation2 + $0x341] sm:$0x1] %vm41, 0.0
  %113 = vst.msk [vmem:[#allocation2 + $0x359] sm:$0x1] %vm41, 0.0
  %v114 = vld [vmem:[%s0] sm:$0xff]
  %v115 = vld [vmem:[%s0 + $0x8] sm:$0xff]
  %v116 = vld [vmem:[%s0 + $0x10] sm:$0xff]
  %v117 = vld [vmem:[%s0 + $0x18] sm:$0xff]
  %v118 = vld [vmem:[%s0 + $0x20] sm:$0xff]
  %v119 = vld [vmem:[%s0 + $0x28] sm:$0xff]
  %v120 = vld [vmem:[%s0 + $0x30] sm:$0xff]
  %v121 = vld [vmem:[%s0 + $0x38] sm:$0xff]
  %v122 = vld [vmem:[%s0 + $0x40] sm:$0xff]
  %v123 = vld [vmem:[%s0 + $0x48] sm:$0xff]
  %v124 = vld [vmem:[%s0 + $0x50] sm:$0xff]
  %v125 = vld [vmem:[%s0 + $0x58] sm:$0xff]
  %v126 = vld [vmem:[%s0 + $0x60] sm:$0xff]
  %v127 = vld [vmem:[%s0 + $0x68] sm:$0xff]
  %v128 = vld [vmem:[%s0 + $0x70] sm:$0xff]
  %v129 = vld [vmem:[%s0 + $0x78] sm:$0xff]
  %v130 = vld [vmem:[%s0 + $0x80] sm:$0xff]
  %v131 = vld [vmem:[%s0 + $0x88] sm:$0xff]
  %v132 = vld [vmem:[%s0 + $0x90] sm:$0xff]
  %v133 = vld [vmem:[%s0 + $0x98] sm:$0xff]
  %v134 = vld [vmem:[%s0 + $0xa0] sm:$0xff]
  %v135 = vld [vmem:[%s0 + $0xa8] sm:$0xff]
  %v136 = vld [vmem:[%s0 + $0xb0] sm:$0xff]
  %v137 = vld [vmem:[%s0 + $0xb8] sm:$0xff]
  %v138 = vld [vmem:[%s0 + $0xc0] sm:$0xff]
  %v139 = vld [vmem:[%s0 + $0xc8] sm:$0xff]
  %v140 = vld [vmem:[%s0 + $0xd0] sm:$0xff]
  %v141 = vld [vmem:[%s0 + $0xd8] sm:$0xff]
  %v142 = vld [vmem:[%s0 + $0xe0] sm:$0xff]
  %v143 = vld [vmem:[%s0 + $0xe8] sm:$0xff]
  %v144 = vld [vmem:[%s0 + $0xf0] sm:$0xff]
  %v145 = vld [vmem:[%s0 + $0xf8] sm:$0xff]
  %v146 = vld [vmem:[%s0 + $0x100] sm:$0xff]
  %v147 = vld [vmem:[%s0 + $0x108] sm:$0xff]
  %v148 = vld [vmem:[%s0 + $0x110] sm:$0xff]
  %v149 = vld [vmem:[%s0 + $0x118] sm:$0xff]
  %v150 = vld [vmem:[%s0 + $0x120] sm:$0xff]
  %v151 = vld [vmem:[%s0 + $0x128] sm:$0xff]
  %v152 = vld [vmem:[%s0 + $0x130] sm:$0xff]
  %v153 = vld [vmem:[%s0 + $0x138] sm:$0xff]
  %v154 = vld [vmem:[%s0 + $0x140] sm:$0xff]
  %v155 = vld [vmem:[%s0 + $0x148] sm:$0xff]
  %v156 = vld [vmem:[%s0 + $0x150] sm:$0xff]
  %v157 = vld [vmem:[%s0 + $0x158] sm:$0xff]
  %v158 = vld [vmem:[%s0 + $0x160] sm:$0xff]
  %v159 = vld [vmem:[%s0 + $0x168] sm:$0xff]
  %v160 = vld [vmem:[%s0 + $0x170] sm:$0xff]
  %v161 = vld [vmem:[%s0 + $0x178] sm:$0xff]
  %v162 = vld [vmem:[%s0 + $0x180] sm:$0xff]
  %v163 = vld [vmem:[%s0 + $0x188] sm:$0xff]
  %v164 = vld [vmem:[%s0 + $0x190] sm:$0xff]
  %v165 = vld [vmem:[%s0 + $0x198] sm:$0xff]
  %v166 = vld [vmem:[%s0 + $0x1a0] sm:$0xff]
  %v167 = vld [vmem:[%s0 + $0x1a8] sm:$0xff]
  %v168 = vld [vmem:[%s0 + $0x1b0] sm:$0xff]
  %v169 = vld [vmem:[%s0 + $0x1b8] sm:$0xff]
  %v170 = vld [vmem:[%s0 + $0x1c0] sm:$0xff]
  %v171 = vld [vmem:[%s0 + $0x1c8] sm:$0xff]
  %v172 = vld [vmem:[%s0 + $0x1d0] sm:$0xff]
  %v173 = vld [vmem:[%s0 + $0x1d8] sm:$0xff]
  %v174 = vld [vmem:[%s0 + $0x1e0] sm:$0xff]
  %v175 = vld [vmem:[%s0 + $0x1e8] sm:$0xff]
  %v176 = vld [vmem:[%s0 + $0x1f0] sm:$0xff]
  %v177 = vld [vmem:[%s0 + $0x1f8] sm:$0xff]
  %s178 = scalar_lea.vmem [#allocation2], 24
  %179 = vst.msk [vmem:[%s178 + $0x1] sm:$0xff] %vm26, %v114
  %180 = vst.msk [vmem:[%s178 + $0x9] sm:$0xff] %vm26, %v115
  %181 = vst.msk [vmem:[%s178 + $0x19] sm:$0xff] %vm26, %v116
  %182 = vst.msk [vmem:[%s178 + $0x21] sm:$0xff] %vm26, %v117
  %183 = vst.msk [vmem:[%s178 + $0x31] sm:$0xff] %vm26, %v118
  %184 = vst.msk [vmem:[%s178 + $0x39] sm:$0xff] %vm26, %v119
  %185 = vst.msk [vmem:[%s178 + $0x49] sm:$0xff] %vm26, %v120
  %186 = vst.msk [vmem:[%s178 + $0x51] sm:$0xff] %vm26, %v121
  %187 = vst.msk [vmem:[%s178 + $0x61] sm:$0xff] %vm26, %v122
  %188 = vst.msk [vmem:[%s178 + $0x69] sm:$0xff] %vm26, %v123
  %189 = vst.msk [vmem:[%s178 + $0x79] sm:$0xff] %vm26, %v124
  %190 = vst.msk [vmem:[%s178 + $0x81] sm:$0xff] %vm26, %v125
  %191 = vst.msk [vmem:[%s178 + $0x91] sm:$0xff] %vm26, %v126
  %192 = vst.msk [vmem:[%s178 + $0x99] sm:$0xff] %vm26, %v127
  %193 = vst.msk [vmem:[%s178 + $0xa9] sm:$0xff] %vm26, %v128
  %194 = vst.msk [vmem:[%s178 + $0xb1] sm:$0xff] %vm26, %v129
  %195 = vst.msk [vmem:[%s178 + $0xc1] sm:$0xff] %vm26, %v130
  %196 = vst.msk [vmem:[%s178 + $0xc9] sm:$0xff] %vm26, %v131
  %197 = vst.msk [vmem:[%s178 + $0xd9] sm:$0xff] %vm26, %v132
  %198 = vst.msk [vmem:[%s178 + $0xe1] sm:$0xff] %vm26, %v133
  %199 = vst.msk [vmem:[%s178 + $0xf1] sm:$0xff] %vm26, %v134
  %200 = vst.msk [vmem:[%s178 + $0xf9] sm:$0xff] %vm26, %v135
  %201 = vst.msk [vmem:[%s178 + $0x109] sm:$0xff] %vm26, %v136
  %202 = vst.msk [vmem:[%s178 + $0x111] sm:$0xff] %vm26, %v137
  %203 = vst.msk [vmem:[%s178 + $0x121] sm:$0xff] %vm26, %v138
  %204 = vst.msk [vmem:[%s178 + $0x129] sm:$0xff] %vm26, %v139
  %205 = vst.msk [vmem:[%s178 + $0x139] sm:$0xff] %vm26, %v140
  %206 = vst.msk [vmem:[%s178 + $0x141] sm:$0xff] %vm26, %v141
  %207 = vst.msk [vmem:[%s178 + $0x151] sm:$0xff] %vm26, %v142
  %208 = vst.msk [vmem:[%s178 + $0x159] sm:$0xff] %vm26, %v143
  %209 = vst.msk [vmem:[%s178 + $0x169] sm:$0xff] %vm26, %v144
  %210 = vst.msk [vmem:[%s178 + $0x171] sm:$0xff] %vm26, %v145
  %211 = vst.msk [vmem:[%s178 + $0x1b1] sm:$0xff] %vm26, %v146
  %212 = vst.msk [vmem:[%s178 + $0x1b9] sm:$0xff] %vm26, %v147
  %213 = vst.msk [vmem:[%s178 + $0x1c9] sm:$0xff] %vm26, %v148
  %214 = vst.msk [vmem:[%s178 + $0x1d1] sm:$0xff] %vm26, %v149
  %215 = vst.msk [vmem:[%s178 + $0x1e1] sm:$0xff] %vm26, %v150
  %216 = vst.msk [vmem:[%s178 + $0x1e9] sm:$0xff] %vm26, %v151
  %217 = vst.msk [vmem:[%s178 + $0x1f9] sm:$0xff] %vm26, %v152
  %218 = vst.msk [vmem:[%s178 + $0x201] sm:$0xff] %vm26, %v153
  %219 = vst.msk [vmem:[%s178 + $0x211] sm:$0xff] %vm26, %v154
  %220 = vst.msk [vmem:[%s178 + $0x219] sm:$0xff] %vm26, %v155
  %221 = vst.msk [vmem:[%s178 + $0x229] sm:$0xff] %vm26, %v156
  %222 = vst.msk [vmem:[%s178 + $0x231] sm:$0xff] %vm26, %v157
  %223 = vst.msk [vmem:[%s178 + $0x241] sm:$0xff] %vm26, %v158
  %224 = vst.msk [vmem:[%s178 + $0x249] sm:$0xff] %vm26, %v159
  %225 = vst.msk [vmem:[%s178 + $0x259] sm:$0xff] %vm26, %v160
  %226 = vst.msk [vmem:[%s178 + $0x261] sm:$0xff] %vm26, %v161
  %227 = vst.msk [vmem:[%s178 + $0x271] sm:$0xff] %vm26, %v162
  %228 = vst.msk [vmem:[%s178 + $0x279] sm:$0xff] %vm26, %v163
  %229 = vst.msk [vmem:[%s178 + $0x289] sm:$0xff] %vm26, %v164
  %230 = vst.msk [vmem:[%s178 + $0x291] sm:$0xff] %vm26, %v165
  %231 = vst.msk [vmem:[%s178 + $0x2a1] sm:$0xff] %vm26, %v166
  %232 = vst.msk [vmem:[%s178 + $0x2a9] sm:$0xff] %vm26, %v167
  %233 = vst.msk [vmem:[%s178 + $0x2b9] sm:$0xff] %vm26, %v168
  %234 = vst.msk [vmem:[%s178 + $0x2c1] sm:$0xff] %vm26, %v169
  %235 = vst.msk [vmem:[%s178 + $0x2d1] sm:$0xff] %vm26, %v170
  %236 = vst.msk [vmem:[%s178 + $0x2d9] sm:$0xff] %vm26, %v171
  %237 = vst.msk [vmem:[%s178 + $0x2e9] sm:$0xff] %vm26, %v172
  %238 = vst.msk [vmem:[%s178 + $0x2f1] sm:$0xff] %vm26, %v173
  %239 = vst.msk [vmem:[%s178 + $0x301] sm:$0xff] %vm26, %v174
  %240 = vst.msk [vmem:[%s178 + $0x309] sm:$0xff] %vm26, %v175
  %241 = vst.msk [vmem:[%s178 + $0x319] sm:$0xff] %vm26, %v176
  %242 = vst.msk [vmem:[%s178 + $0x321] sm:$0xff] %vm26, %v177
  %v243 = vld [vmem:[#allocation2] sm:$0xff]
  %v244 = vld [vmem:[#allocation2 + $0x8] sm:$0xff]
  %v245 = vld [vmem:[#allocation2 + $0x18] sm:$0xff]
  %v246 = vld [vmem:[#allocation2 + $0x20] sm:$0xff]
  %v247 = vld [vmem:[#allocation2 + $0x30] sm:$0xff]
  %v248 = vld [vmem:[#allocation2 + $0x38] sm:$0xff]
  %v249 = vld [vmem:[#allocation2 + $0x48] sm:$0xff]
  %v250 = vld [vmem:[#allocation2 + $0x50] sm:$0xff]
  %v251 = vld [vmem:[#allocation2 + $0x60] sm:$0xff]
  %v252 = vld [vmem:[#allocation2 + $0x68] sm:$0xff]
  %v253 = vld [vmem:[#allocation2 + $0x78] sm:$0xff]
  %v254 = vld [vmem:[#allocation2 + $0x80] sm:$0xff]
  %v255 = vld [vmem:[#allocation2 + $0x90] sm:$0xff]
  %v256 = vld [vmem:[#allocation2 + $0x98] sm:$0xff]
  %v257 = vld [vmem:[#allocation2 + $0xa8] sm:$0xff]
  %v258 = vld [vmem:[#allocation2 + $0xb0] sm:$0xff]
  %v259 = vld [vmem:[#allocation2 + $0xc0] sm:$0xff]
  %v260 = vld [vmem:[#allocation2 + $0xc8] sm:$0xff]
  %v261 = vld [vmem:[#allocation2 + $0xd8] sm:$0xff]
  %v262 = vld [vmem:[#allocation2 + $0xe0] sm:$0xff]
  %v263 = vld [vmem:[#allocation2 + $0xf0] sm:$0xff]
  %v264 = vld [vmem:[#allocation2 + $0xf8] sm:$0xff]
  %v265 = vld [vmem:[#allocation2 + $0x108] sm:$0xff]
  %v266 = vld [vmem:[#allocation2 + $0x110] sm:$0xff]
  %v267 = vld [vmem:[#allocation2 + $0x120] sm:$0xff]
  %v268 = vld [vmem:[#allocation2 + $0x128] sm:$0xff]
  %v269 = vld [vmem:[#allocation2 + $0x138] sm:$0xff]
  %v270 = vld [vmem:[#allocation2 + $0x140] sm:$0xff]
  %v271 = vld [vmem:[#allocation2 + $0x150] sm:$0xff]
  %v272 = vld [vmem:[#allocation2 + $0x158] sm:$0xff]
  %v273 = vld [vmem:[#allocation2 + $0x168] sm:$0xff]
  %v274 = vld [vmem:[#allocation2 + $0x170] sm:$0xff]
  %v275 = vld [vmem:[#allocation2 + $0x1b0] sm:$0xff]
  %v276 = vld [vmem:[#allocation2 + $0x1b8] sm:$0xff]
  %v277 = vld [vmem:[#allocation2 + $0x1c8] sm:$0xff]
  %v278 = vld [vmem:[#allocation2 + $0x1d0] sm:$0xff]
  %v279 = vld [vmem:[#allocation2 + $0x1e0] sm:$0xff]
  %v280 = vld [vmem:[#allocation2 + $0x1e8] sm:$0xff]
  %v281 = vld [vmem:[#allocation2 + $0x1f8] sm:$0xff]
  %v282 = vld [vmem:[#allocation2 + $0x200] sm:$0xff]
  %v283 = vld [vmem:[#allocation2 + $0x210] sm:$0xff]
  %v284 = vld [vmem:[#allocation2 + $0x218] sm:$0xff]
  %v285 = vld [vmem:[#allocation2 + $0x228] sm:$0xff]
  %v286 = vld [vmem:[#allocation2 + $0x230] sm:$0xff]
  %v287 = vld [vmem:[#allocation2 + $0x240] sm:$0xff]
  %v288 = vld [vmem:[#allocation2 + $0x248] sm:$0xff]
  %v289 = vld [vmem:[#allocation2 + $0x258] sm:$0xff]
  %v290 = vld [vmem:[#allocation2 + $0x260] sm:$0xff]
  %v291 = vld [vmem:[#allocation2 + $0x270] sm:$0xff]
  %v292 = vld [vmem:[#allocation2 + $0x278] sm:$0xff]
  %v293 = vld [vmem:[#allocation2 + $0x288] sm:$0xff]
  %v294 = vld [vmem:[#allocation2 + $0x290] sm:$0xff]
  %v295 = vld [vmem:[#allocation2 + $0x2a0] sm:$0xff]
  %v296 = vld [vmem:[#allocation2 + $0x2a8] sm:$0xff]
  %v297 = vld [vmem:[#allocation2 + $0x2b8] sm:$0xff]
  %v298 = vld [vmem:[#allocation2 + $0x2c0] sm:$0xff]
  %v299 = vld [vmem:[#allocation2 + $0x2d0] sm:$0xff]
  %v300 = vld [vmem:[#allocation2 + $0x2d8] sm:$0xff]
  %v301 = vld [vmem:[#allocation2 + $0x2e8] sm:$0xff]
  %v302 = vld [vmem:[#allocation2 + $0x2f0] sm:$0xff]
  %v303 = vld [vmem:[#allocation2 + $0x300] sm:$0xff]
  %v304 = vld [vmem:[#allocation2 + $0x308] sm:$0xff]
  %v305 = vld [vmem:[#allocation2 + $0x318] sm:$0xff]
  %v306 = vld [vmem:[#allocation2 + $0x320] sm:$0xff]
  %v307 = vld [vmem:[%s1] sm:$0xf]
  %v308 = vld [vmem:[#allocation2 + $0x1] sm:$0xff]
  %v309 = vld [vmem:[#allocation2 + $0x9] sm:$0xff]
  %v310 = vld [vmem:[#allocation2 + $0x19] sm:$0xff]
  %v311 = vld [vmem:[#allocation2 + $0x21] sm:$0xff]
  %v312 = vld [vmem:[#allocation2 + $0x31] sm:$0xff]
  %v313 = vld [vmem:[#allocation2 + $0x39] sm:$0xff]
  %v314 = vld [vmem:[#allocation2 + $0x49] sm:$0xff]
  %v315 = vld [vmem:[#allocation2 + $0x51] sm:$0xff]
  %v316 = vld [vmem:[#allocation2 + $0x61] sm:$0xff]
  %v317 = vld [vmem:[#allocation2 + $0x69] sm:$0xff]
  %v318 = vld [vmem:[#allocation2 + $0x79] sm:$0xff]
  %v319 = vld [vmem:[#allocation2 + $0x81] sm:$0xff]
  %v320 = vld [vmem:[#allocation2 + $0x91] sm:$0xff]
  %v321 = vld [vmem:[#allocation2 + $0x99] sm:$0xff]
  %v322 = vld [vmem:[#allocation2 + $0xa9] sm:$0xff]
  %v323 = vld [vmem:[#allocation2 + $0xb1] sm:$0xff]
  %v324 = vld [vmem:[#allocation2 + $0xc1] sm:$0xff]
  %v325 = vld [vmem:[#allocation2 + $0xc9] sm:$0xff]
  %v326 = vld [vmem:[#allocation2 + $0xd9] sm:$0xff]
  %v327 = vld [vmem:[#allocation2 + $0xe1] sm:$0xff]
  %v328 = vld [vmem:[#allocation2 + $0xf1] sm:$0xff]
  %v329 = vld [vmem:[#allocation2 + $0xf9] sm:$0xff]
  %v330 = vld [vmem:[#allocation2 + $0x109] sm:$0xff]
  %v331 = vld [vmem:[#allocation2 + $0x111] sm:$0xff]
  %v332 = vld [vmem:[#allocation2 + $0x121] sm:$0xff]
  %v333 = vld [vmem:[#allocation2 + $0x129] sm:$0xff]
  %v334 = vld [vmem:[#allocation2 + $0x139] sm:$0xff]
  %v335 = vld [vmem:[#allocation2 + $0x141] sm:$0xff]
  %v336 = vld [vmem:[#allocation2 + $0x151] sm:$0xff]
  %v337 = vld [vmem:[#allocation2 + $0x159] sm:$0xff]
  %v338 = vld [vmem:[#allocation2 + $0x169] sm:$0xff]
  %v339 = vld [vmem:[#allocation2 + $0x171] sm:$0xff]
  %v340 = vld [vmem:[#allocation2 + $0x1b1] sm:$0xff]
  %v341 = vld [vmem:[#allocation2 + $0x1b9] sm:$0xff]
  %v342 = vld [vmem:[#allocation2 + $0x1c9] sm:$0xff]
  %v343 = vld [vmem:[#allocation2 + $0x1d1] sm:$0xff]
  %v344 = vld [vmem:[#allocation2 + $0x1e1] sm:$0xff]
  %v345 = vld [vmem:[#allocation2 + $0x1e9] sm:$0xff]
  %v346 = vld [vmem:[#allocation2 + $0x1f9] sm:$0xff]
  %v347 = vld [vmem:[#allocation2 + $0x201] sm:$0xff]
  %v348 = vld [vmem:[#allocation2 + $0x211] sm:$0xff]
  %v349 = vld [vmem:[#allocation2 + $0x219] sm:$0xff]
  %v350 = vld [vmem:[#allocation2 + $0x229] sm:$0xff]
  %v351 = vld [vmem:[#allocation2 + $0x231] sm:$0xff]
  %v352 = vld [vmem:[#allocation2 + $0x241] sm:$0xff]
  %v353 = vld [vmem:[#allocation2 + $0x249] sm:$0xff]
  %v354 = vld [vmem:[#allocation2 + $0x259] sm:$0xff]
  %v355 = vld [vmem:[#allocation2 + $0x261] sm:$0xff]
  %v356 = vld [vmem:[#allocation2 + $0x271] sm:$0xff]
  %v357 = vld [vmem:[#allocation2 + $0x279] sm:$0xff]
  %v358 = vld [vmem:[#allocation2 + $0x289] sm:$0xff]
  %v359 = vld [vmem:[#allocation2 + $0x291] sm:$0xff]
  %v360 = vld [vmem:[#allocation2 + $0x2a1] sm:$0xff]
  %v361 = vld [vmem:[#allocation2 + $0x2a9] sm:$0xff]
  %v362 = vld [vmem:[#allocation2 + $0x2b9] sm:$0xff]
  %v363 = vld [vmem:[#allocation2 + $0x2c1] sm:$0xff]
  %v364 = vld [vmem:[#allocation2 + $0x2d1] sm:$0xff]
  %v365 = vld [vmem:[#allocation2 + $0x2d9] sm:$0xff]
  %v366 = vld [vmem:[#allocation2 + $0x2e9] sm:$0xff]
  %v367 = vld [vmem:[#allocation2 + $0x2f1] sm:$0xff]
  %v368 = vld [vmem:[#allocation2 + $0x301] sm:$0xff]
  %v369 = vld [vmem:[#allocation2 + $0x309] sm:$0xff]
  %v370 = vld [vmem:[#allocation2 + $0x319] sm:$0xff]
  %v371 = vld [vmem:[#allocation2 + $0x321] sm:$0xff]
  %s372 = scalar_lea.vmem %s1, 4
  %v373 = vld [vmem:[%s372] sm:$0xf]
  %v375 = vsel %vm26, %v308, 0
  %v378 = vsel %vm26, %v309, 0
  %v381 = vsel %vm26, %v310, 0
  %v384 = vsel %vm26, %v311, 0
  %v387 = vsel %vm26, %v312, 0
  %v390 = vsel %vm26, %v313, 0
  %v393 = vsel %vm26, %v314, 0
  %v396 = vsel %vm26, %v315, 0
  %v399 = vsel %vm26, %v316, 0
  %v402 = vsel %vm26, %v317, 0
  %v405 = vsel %vm26, %v318, 0
  %v408 = vsel %vm26, %v319, 0
  %v411 = vsel %vm26, %v320, 0
  %v414 = vsel %vm26, %v321, 0
  %v417 = vsel %vm26, %v322, 0
  %v420 = vsel %vm26, %v323, 0
  %v423 = vsel %vm26, %v324, 0
  %v426 = vsel %vm26, %v325, 0
  %v429 = vsel %vm26, %v326, 0
  %v432 = vsel %vm26, %v327, 0
  %v435 = vsel %vm26, %v328, 0
  %v438 = vsel %vm26, %v329, 0
  %v441 = vsel %vm26, %v330, 0
  %v444 = vsel %vm26, %v331, 0
  %v447 = vsel %vm26, %v332, 0
  %v450 = vsel %vm26, %v333, 0
  %v453 = vsel %vm26, %v334, 0
  %v456 = vsel %vm26, %v335, 0
  %v459 = vsel %vm26, %v336, 0
  %v462 = vsel %vm26, %v337, 0
  %v465 = vsel %vm26, %v338, 0
  %v468 = vsel %vm26, %v339, 0
  %v471 = vsel %vm26, %v340, 0
  %v474 = vsel %vm26, %v341, 0
  %v477 = vsel %vm26, %v342, 0
  %v480 = vsel %vm26, %v343, 0
  %v483 = vsel %vm26, %v344, 0
  %v486 = vsel %vm26, %v345, 0
  %v489 = vsel %vm26, %v346, 0
  %v492 = vsel %vm26, %v347, 0
  %v495 = vsel %vm26, %v348, 0
  %v498 = vsel %vm26, %v349, 0
  %v501 = vsel %vm26, %v350, 0
  %v504 = vsel %vm26, %v351, 0
  %v507 = vsel %vm26, %v352, 0
  %v510 = vsel %vm26, %v353, 0
  %v513 = vsel %vm26, %v354, 0
  %v516 = vsel %vm26, %v355, 0
  %v519 = vsel %vm26, %v356, 0
  %v522 = vsel %vm26, %v357, 0
  %v525 = vsel %vm26, %v358, 0
  %v528 = vsel %vm26, %v359, 0
  %v531 = vsel %vm26, %v360, 0
  %v534 = vsel %vm26, %v361, 0
  %v537 = vsel %vm26, %v362, 0
  %v540 = vsel %vm26, %v363, 0
  %v543 = vsel %vm26, %v364, 0
  %v546 = vsel %vm26, %v365, 0
  %v549 = vsel %vm26, %v366, 0
  %v552 = vsel %vm26, %v367, 0
  %v555 = vsel %vm26, %v368, 0
  %v558 = vsel %vm26, %v369, 0
  %v561 = vsel %vm26, %v370, 0
  %v564 = vsel %vm26, %v371, 0
  %vm566 = vcmask 1043456
  %v568 = vsel %vm566, %v373, 0
  %570 = vmatprep.subr.mxu0 0.0
  %571 = vmatpush1.msra.mxu0 %v568
  %572 = vmatprep.subr.mxu0 0.0
  %573 = vmatpush1.msra.mxu0 0.0
  %574 = vmatprep.subr.mxu0 0.0
  %575 = vmatpush1.msra.mxu0 0.0
  %576 = vmatprep.subr.mxu0 0.0
  %577 = vmatpush1.msra.mxu0 0.0
  %578 = vmatprep.subr.mxu0 0.0
  %579 = vmatpush1.msra.mxu0 0.0
  %580 = vmatprep.subr.mxu0 0.0
  %581 = vmatpush1.msra.mxu0 0.0
  %582 = vmatprep.subr.mxu0 0.0
  %583 = vmatpush1.msra.mxu0 0.0
  %584 = vmatprep.subr.mxu0 0.0
  %585 = vmatpush1.msra.mxu0 0.0
  %586 = vmatprep.subr.mxu0 0.0
  %587 = vmatpush1.msra.mxu0 0.0
  %588 = vmatprep.subr.mxu0 0.0
  %589 = vmatpush1.msra.mxu0 0.0
  %590 = vmatprep.subr.mxu0 0.0
  %591 = vmatpush1.msra.mxu0 0.0
  %592 = vmatprep.subr.mxu0 0.0
  %593 = vmatpush1.msra.mxu0 0.0
  %594 = vmatprep.subr.mxu0 0.0
  %595 = vmatpush1.msra.mxu0 0.0
  %596 = vmatprep.subr.mxu0 0.0
  %597 = vmatpush1.msra.mxu0 0.0
  %598 = vmatprep.subr.mxu0 0.0
  %599 = vmatpush1.msra.mxu0 0.0
  %600 = vmatprep.subr.mxu0 0.0
  %601 = vmatpush1.msra.mxu0 0.0
  %602 = vmatprep.subr.mxu0 0.0
  %603 = vmatpush1.msra.mxu0 0.0
  %604 = vmatprep.subr.mxu0 0.0
  %605 = vmatpush1.msra.mxu0 0.0
  %606 = vmatprep.subr.mxu0 0.0
  %607 = vmatpush1.msra.mxu0 0.0
  %608 = vmatprep.subr.mxu0 0.0
  %609 = vmatpush1.msra.mxu0 0.0
  %610 = vmatprep.subr.mxu0 0.0
  %611 = vmatpush1.msra.mxu0 0.0
  %612 = vmatprep.subr.mxu0 0.0
  %613 = vmatpush1.msra.mxu0 0.0
  %614 = vmatprep.subr.mxu0 0.0
  %615 = vmatpush1.msra.mxu0 0.0
  %616 = vmatprep.subr.mxu0 0.0
  %617 = vmatpush1.msra.mxu0 0.0
  %618 = vmatprep.subr.mxu0 0.0
  %619 = vmatpush1.msra.mxu0 0.0
  %620 = vmatprep.subr.mxu0 0.0
  %621 = vmatpush1.msra.mxu0 0.0
  %622 = vmatprep.subr.mxu0 0.0
  %623 = vmatpush1.msra.mxu0 0.0
  %624 = vmatprep.subr.mxu0 0.0
  %625 = vmatpush1.msra.mxu0 0.0
  %626 = vmatprep.subr.mxu0 0.0
  %627 = vmatpush1.msra.mxu0 0.0
  %628 = vmatprep.subr.mxu0 0.0
  %629 = vmatpush1.msra.mxu0 0.0
  %630 = vmatprep.subr.mxu0 0.0
  %631 = vmatpush1.msra.mxu0 0.0
  %632 = vmatprep.subr.mxu0 0.0
  %633 = vmatpush1.msra.mxu0 0.0
  %634 = vmatprep.mubr.f32.mxu0 0.0
  %635 = vmatmul.mubr.f32.gmra.mrb[0].mxu0 %v375
  %v636 = vpop.f32.mrb[0].mxu0
  %v637 = vadd.f32 0.0, %v636
  %v638 = vpop.f32.mrb[0].mxu0
  %639 = vmatprep.mubr.f32.mxu0 0.0
  %640 = vmatmul.mubr.f32.gmra.mrb[0].mxu0 %v378
  %v641 = vpop.f32.mrb[0].mxu0
  %v642 = vadd.f32 0.0, %v641
  %v643 = vpop.f32.mrb[0].mxu0
  %644 = vmatprep.mubr.f32.mxu0 0.0
  %645 = vmatmul.mubr.f32.gmra.mrb[0].mxu0 %v381
  %v646 = vpop.f32.mrb[0].mxu0
  %v647 = vadd.f32 0.0, %v646
  %v648 = vpop.f32.mrb[0].mxu0
  %649 = vmatprep.mubr.f32.mxu0 0.0
  %650 = vmatmul.mubr.f32.gmra.mrb[0].mxu0 %v384
  %v651 = vpop.f32.mrb[0].mxu0
  %v652 = vadd.f32 0.0, %v651
  %v653 = vpop.f32.mrb[0].mxu0
  %654 = vmatprep.mubr.f32.mxu0 0.0
  %655 = vmatmul.mubr.f32.gmra.mrb[0].mxu0 %v387
  %v656 = vpop.f32.mrb[0].mxu0
  %v657 = vadd.f32 0.0, %v656
  %v658 = vpop.f32.mrb[0].mxu0
  %659 = vmatprep.mubr.f32.mxu0 0.0
  %660 = vmatmul.mubr.f32.gmra.mrb[0].mxu0 %v390
  %v661 = vpop.f32.mrb[0].mxu0
  %v662 = vadd.f32 0.0, %v661
  %v663 = vpop.f32.mrb[0].mxu0
  %664 = vmatprep.mubr.f32.mxu0 0.0
  %665 = vmatmul.mubr.f32.gmra.mrb[0].mxu0 %v393
  %v666 = vpop.f32.mrb[0].mxu0
  %v667 = vadd.f32 0.0, %v666
  %v668 = vpop.f32.mrb[0].mxu0
  %669 = vmatprep.mubr.f32.mxu0 0.0
  %670 = vmatmul.mubr.f32.gmra.mrb[0].mxu0 %v396
  %v671 = vpop.f32.mrb[0].mxu0
  %v672 = vadd.f32 0.0, %v671
  %v673 = vpop.f32.mrb[0].mxu0
  %674 = vmatprep.mubr.f32.mxu0 0.0
  %675 = vmatmul.mubr.f32.gmra.mrb[0].mxu0 %v399
  %v676 = vpop.f32.mrb[0].mxu0
  %v677 = vadd.f32 0.0, %v676
  %v678 = vpop.f32.mrb[0].mxu0
  %679 = vmatprep.mubr.f32.mxu0 0.0
  %680 = vmatmul.mubr.f32.gmra.mrb[0].mxu0 %v402
  %v681 = vpop.f32.mrb[0].mxu0
  %v682 = vadd.f32 0.0, %v681
  %v683 = vpop.f32.mrb[0].mxu0
  %684 = vmatprep.mubr.f32.mxu0 0.0
  %685 = vmatmul.mubr.f32.gmra.mrb[0].mxu0 %v405
  %v686 = vpop.f32.mrb[0].mxu0
  %v687 = vadd.f32 0.0, %v686
  %v688 = vpop.f32.mrb[0].mxu0
  %689 = vmatprep.mubr.f32.mxu0 0.0
  %690 = vmatmul.mubr.f32.gmra.mrb[0].mxu0 %v408
  %v691 = vpop.f32.mrb[0].mxu0
  %v692 = vadd.f32 0.0, %v691
  %v693 = vpop.f32.mrb[0].mxu0
  %694 = vmatprep.mubr.f32.mxu0 0.0
  %695 = vmatmul.mubr.f32.gmra.mrb[0].mxu0 %v411
  %v696 = vpop.f32.mrb[0].mxu0
  %v697 = vadd.f32 0.0, %v696
  %v698 = vpop.f32.mrb[0].mxu0
  %699 = vmatprep.mubr.f32.mxu0 0.0
  %700 = vmatmul.mubr.f32.gmra.mrb[0].mxu0 %v414
  %v701 = vpop.f32.mrb[0].mxu0
  %v702 = vadd.f32 0.0, %v701
  %v703 = vpop.f32.mrb[0].mxu0
  %704 = vmatprep.mubr.f32.mxu0 0.0
  %705 = vmatmul.mubr.f32.gmra.mrb[0].mxu0 %v417
  %v706 = vpop.f32.mrb[0].mxu0
  %v707 = vadd.f32 0.0, %v706
  %v708 = vpop.f32.mrb[0].mxu0
  %709 = vmatprep.mubr.f32.mxu0 0.0
  %710 = vmatmul.mubr.f32.gmra.mrb[0].mxu0 %v420
  %v711 = vpop.f32.mrb[0].mxu0
  %v712 = vadd.f32 0.0, %v711
  %v713 = vpop.f32.mrb[0].mxu0
  %714 = vmatprep.mubr.f32.mxu0 0.0
  %715 = vmatmul.mubr.f32.gmra.mrb[0].mxu0 %v423
  %v716 = vpop.f32.mrb[0].mxu0
  %v717 = vadd.f32 0.0, %v716
  %v718 = vpop.f32.mrb[0].mxu0
  %719 = vmatprep.mubr.f32.mxu0 0.0
  %720 = vmatmul.mubr.f32.gmra.mrb[0].mxu0 %v426
  %v721 = vpop.f32.mrb[0].mxu0
  %v722 = vadd.f32 0.0, %v721
  %v723 = vpop.f32.mrb[0].mxu0
  %724 = vmatprep.mubr.f32.mxu0 0.0
  %725 = vmatmul.mubr.f32.gmra.mrb[0].mxu0 %v429
  %v726 = vpop.f32.mrb[0].mxu0
  %v727 = vadd.f32 0.0, %v726
  %v728 = vpop.f32.mrb[0].mxu0
  %729 = vmatprep.mubr.f32.mxu0 0.0
  %730 = vmatmul.mubr.f32.gmra.mrb[0].mxu0 %v432
  %v731 = vpop.f32.mrb[0].mxu0
  %v732 = vadd.f32 0.0, %v731
  %v733 = vpop.f32.mrb[0].mxu0
  %734 = vmatprep.mubr.f32.mxu0 0.0
  %735 = vmatmul.mubr.f32.gmra.mrb[0].mxu0 %v435
  %v736 = vpop.f32.mrb[0].mxu0
  %v737 = vadd.f32 0.0, %v736
  %v738 = vpop.f32.mrb[0].mxu0
  %739 = vmatprep.mubr.f32.mxu0 0.0
  %740 = vmatmul.mubr.f32.gmra.mrb[0].mxu0 %v438
  %v741 = vpop.f32.mrb[0].mxu0
  %v742 = vadd.f32 0.0, %v741
  %v743 = vpop.f32.mrb[0].mxu0
  %744 = vmatprep.mubr.f32.mxu0 0.0
  %745 = vmatmul.mubr.f32.gmra.mrb[0].mxu0 %v441
  %v746 = vpop.f32.mrb[0].mxu0
  %v747 = vadd.f32 0.0, %v746
  %v748 = vpop.f32.mrb[0].mxu0
  %749 = vmatprep.mubr.f32.mxu0 0.0
  %750 = vmatmul.mubr.f32.gmra.mrb[0].mxu0 %v444
  %v751 = vpop.f32.mrb[0].mxu0
  %v752 = vadd.f32 0.0, %v751
  %v753 = vpop.f32.mrb[0].mxu0
  %754 = vmatprep.mubr.f32.mxu0 0.0
  %755 = vmatmul.mubr.f32.gmra.mrb[0].mxu0 %v447
  %v756 = vpop.f32.mrb[0].mxu0
  %v757 = vadd.f32 0.0, %v756
  %v758 = vpop.f32.mrb[0].mxu0
  %759 = vmatprep.mubr.f32.mxu0 0.0
  %760 = vmatmul.mubr.f32.gmra.mrb[0].mxu0 %v450
  %v761 = vpop.f32.mrb[0].mxu0
  %v762 = vadd.f32 0.0, %v761
  %v763 = vpop.f32.mrb[0].mxu0
  %764 = vmatprep.mubr.f32.mxu0 0.0
  %765 = vmatmul.mubr.f32.gmra.mrb[0].mxu0 %v453
  %v766 = vpop.f32.mrb[0].mxu0
  %v767 = vadd.f32 0.0, %v766
  %v768 = vpop.f32.mrb[0].mxu0
  %769 = vmatprep.mubr.f32.mxu0 0.0
  %770 = vmatmul.mubr.f32.gmra.mrb[0].mxu0 %v456
  %v771 = vpop.f32.mrb[0].mxu0
  %v772 = vadd.f32 0.0, %v771
  %v773 = vpop.f32.mrb[0].mxu0
  %774 = vmatprep.mubr.f32.mxu0 0.0
  %775 = vmatmul.mubr.f32.gmra.mrb[0].mxu0 %v459
  %v776 = vpop.f32.mrb[0].mxu0
  %v777 = vadd.f32 0.0, %v776
  %v778 = vpop.f32.mrb[0].mxu0
  %779 = vmatprep.mubr.f32.mxu0 0.0
  %780 = vmatmul.mubr.f32.gmra.mrb[0].mxu0 %v462
  %v781 = vpop.f32.mrb[0].mxu0
  %v782 = vadd.f32 0.0, %v781
  %v783 = vpop.f32.mrb[0].mxu0
  %784 = vmatprep.mubr.f32.mxu0 0.0
  %785 = vmatmul.mubr.f32.gmra.mrb[0].mxu0 %v465
  %v786 = vpop.f32.mrb[0].mxu0
  %v787 = vadd.f32 0.0, %v786
  %v788 = vpop.f32.mrb[0].mxu0
  %789 = vmatprep.mubr.f32.mxu0 0.0
  %790 = vmatmul.mubr.f32.gmra.mrb[0].mxu0 %v468
  %v791 = vpop.f32.mrb[0].mxu0
  %v792 = vadd.f32 0.0, %v791
  %v793 = vpop.f32.mrb[0].mxu0
  %794 = vmatprep.mubr.f32.mxu0 0.0
  %795 = vmatmul.mubr.f32.gmra.mrb[0].mxu0 %v471
  %v796 = vpop.f32.mrb[0].mxu0
  %v797 = vadd.f32 0.0, %v796
  %v798 = vpop.f32.mrb[0].mxu0
  %799 = vmatprep.mubr.f32.mxu0 0.0
  %800 = vmatmul.mubr.f32.gmra.mrb[0].mxu0 %v474
  %v801 = vpop.f32.mrb[0].mxu0
  %v802 = vadd.f32 0.0, %v801
  %v803 = vpop.f32.mrb[0].mxu0
  %804 = vmatprep.mubr.f32.mxu0 0.0
  %805 = vmatmul.mubr.f32.gmra.mrb[0].mxu0 %v477
  %v806 = vpop.f32.mrb[0].mxu0
  %v807 = vadd.f32 0.0, %v806
  %v808 = vpop.f32.mrb[0].mxu0
  %809 = vmatprep.mubr.f32.mxu0 0.0
  %810 = vmatmul.mubr.f32.gmra.mrb[0].mxu0 %v480
  %v811 = vpop.f32.mrb[0].mxu0
  %v812 = vadd.f32 0.0, %v811
  %v813 = vpop.f32.mrb[0].mxu0
  %814 = vmatprep.mubr.f32.mxu0 0.0
  %815 = vmatmul.mubr.f32.gmra.mrb[0].mxu0 %v483
  %v816 = vpop.f32.mrb[0].mxu0
  %v817 = vadd.f32 0.0, %v816
  %v818 = vpop.f32.mrb[0].mxu0
  %819 = vmatprep.mubr.f32.mxu0 0.0
  %820 = vmatmul.mubr.f32.gmra.mrb[0].mxu0 %v486
  %v821 = vpop.f32.mrb[0].mxu0
  %v822 = vadd.f32 0.0, %v821
  %v823 = vpop.f32.mrb[0].mxu0
  %824 = vmatprep.mubr.f32.mxu0 0.0
  %825 = vmatmul.mubr.f32.gmra.mrb[0].mxu0 %v489
  %v826 = vpop.f32.mrb[0].mxu0
  %v827 = vadd.f32 0.0, %v826
  %v828 = vpop.f32.mrb[0].mxu0
  %829 = vmatprep.mubr.f32.mxu0 0.0
  %830 = vmatmul.mubr.f32.gmra.mrb[0].mxu0 %v492
  %v831 = vpop.f32.mrb[0].mxu0
  %v832 = vadd.f32 0.0, %v831
  %v833 = vpop.f32.mrb[0].mxu0
  %834 = vmatprep.mubr.f32.mxu0 0.0
  %835 = vmatmul.mubr.f32.gmra.mrb[0].mxu0 %v495
  %v836 = vpop.f32.mrb[0].mxu0
  %v837 = vadd.f32 0.0, %v836
  %v838 = vpop.f32.mrb[0].mxu0
  %839 = vmatprep.mubr.f32.mxu0 0.0
  %840 = vmatmul.mubr.f32.gmra.mrb[0].mxu0 %v498
  %v841 = vpop.f32.mrb[0].mxu0
  %v842 = vadd.f32 0.0, %v841
  %v843 = vpop.f32.mrb[0].mxu0
  %844 = vmatprep.mubr.f32.mxu0 0.0
  %845 = vmatmul.mubr.f32.gmra.mrb[0].mxu0 %v501
  %v846 = vpop.f32.mrb[0].mxu0
  %v847 = vadd.f32 0.0, %v846
  %v848 = vpop.f32.mrb[0].mxu0
  %849 = vmatprep.mubr.f32.mxu0 0.0
  %850 = vmatmul.mubr.f32.gmra.mrb[0].mxu0 %v504
  %v851 = vpop.f32.mrb[0].mxu0
  %v852 = vadd.f32 0.0, %v851
  %v853 = vpop.f32.mrb[0].mxu0
  %854 = vmatprep.mubr.f32.mxu0 0.0
  %855 = vmatmul.mubr.f32.gmra.mrb[0].mxu0 %v507
  %v856 = vpop.f32.mrb[0].mxu0
  %v857 = vadd.f32 0.0, %v856
  %v858 = vpop.f32.mrb[0].mxu0
  %859 = vmatprep.mubr.f32.mxu0 0.0
  %860 = vmatmul.mubr.f32.gmra.mrb[0].mxu0 %v510
  %v861 = vpop.f32.mrb[0].mxu0
  %v862 = vadd.f32 0.0, %v861
  %v863 = vpop.f32.mrb[0].mxu0
  %864 = vmatprep.mubr.f32.mxu0 0.0
  %865 = vmatmul.mubr.f32.gmra.mrb[0].mxu0 %v513
  %v866 = vpop.f32.mrb[0].mxu0
  %v867 = vadd.f32 0.0, %v866
  %v868 = vpop.f32.mrb[0].mxu0
  %869 = vmatprep.mubr.f32.mxu0 0.0
  %870 = vmatmul.mubr.f32.gmra.mrb[0].mxu0 %v516
  %v871 = vpop.f32.mrb[0].mxu0
  %v872 = vadd.f32 0.0, %v871
  %v873 = vpop.f32.mrb[0].mxu0
  %874 = vmatprep.mubr.f32.mxu0 0.0
  %875 = vmatmul.mubr.f32.gmra.mrb[0].mxu0 %v519
  %v876 = vpop.f32.mrb[0].mxu0
  %v877 = vadd.f32 0.0, %v876
  %v878 = vpop.f32.mrb[0].mxu0
  %879 = vmatprep.mubr.f32.mxu0 0.0
  %880 = vmatmul.mubr.f32.gmra.mrb[0].mxu0 %v522
  %v881 = vpop.f32.mrb[0].mxu0
  %v882 = vadd.f32 0.0, %v881
  %v883 = vpop.f32.mrb[0].mxu0
  %884 = vmatprep.mubr.f32.mxu0 0.0
  %885 = vmatmul.mubr.f32.gmra.mrb[0].mxu0 %v525
  %v886 = vpop.f32.mrb[0].mxu0
  %v887 = vadd.f32 0.0, %v886
  %v888 = vpop.f32.mrb[0].mxu0
  %889 = vmatprep.mubr.f32.mxu0 0.0
  %890 = vmatmul.mubr.f32.gmra.mrb[0].mxu0 %v528
  %v891 = vpop.f32.mrb[0].mxu0
  %v892 = vadd.f32 0.0, %v891
  %v893 = vpop.f32.mrb[0].mxu0
  %894 = vmatprep.mubr.f32.mxu0 0.0
  %895 = vmatmul.mubr.f32.gmra.mrb[0].mxu0 %v531
  %v896 = vpop.f32.mrb[0].mxu0
  %v897 = vadd.f32 0.0, %v896
  %v898 = vpop.f32.mrb[0].mxu0
  %899 = vmatprep.mubr.f32.mxu0 0.0
  %900 = vmatmul.mubr.f32.gmra.mrb[0].mxu0 %v534
  %v901 = vpop.f32.mrb[0].mxu0
  %v902 = vadd.f32 0.0, %v901
  %v903 = vpop.f32.mrb[0].mxu0
  %904 = vmatprep.mubr.f32.mxu0 0.0
  %905 = vmatmul.mubr.f32.gmra.mrb[0].mxu0 %v537
  %v906 = vpop.f32.mrb[0].mxu0
  %v907 = vadd.f32 0.0, %v906
  %v908 = vpop.f32.mrb[0].mxu0
  %909 = vmatprep.mubr.f32.mxu0 0.0
  %910 = vmatmul.mubr.f32.gmra.mrb[0].mxu0 %v540
  %v911 = vpop.f32.mrb[0].mxu0
  %v912 = vadd.f32 0.0, %v911
  %v913 = vpop.f32.mrb[0].mxu0
  %914 = vmatprep.mubr.f32.mxu0 0.0
  %915 = vmatmul.mubr.f32.gmra.mrb[0].mxu0 %v543
  %v916 = vpop.f32.mrb[0].mxu0
  %v917 = vadd.f32 0.0, %v916
  %v918 = vpop.f32.mrb[0].mxu0
  %919 = vmatprep.mubr.f32.mxu0 0.0
  %920 = vmatmul.mubr.f32.gmra.mrb[0].mxu0 %v546
  %v921 = vpop.f32.mrb[0].mxu0
  %v922 = vadd.f32 0.0, %v921
  %v923 = vpop.f32.mrb[0].mxu0
  %924 = vmatprep.mubr.f32.mxu0 0.0
  %925 = vmatmul.mubr.f32.gmra.mrb[0].mxu0 %v549
  %v926 = vpop.f32.mrb[0].mxu0
  %v927 = vadd.f32 0.0, %v926
  %v928 = vpop.f32.mrb[0].mxu0
  %929 = vmatprep.mubr.f32.mxu0 0.0
  %930 = vmatmul.mubr.f32.gmra.mrb[0].mxu0 %v552
  %v931 = vpop.f32.mrb[0].mxu0
  %v932 = vadd.f32 0.0, %v931
  %v933 = vpop.f32.mrb[0].mxu0
  %934 = vmatprep.mubr.f32.mxu0 0.0
  %935 = vmatmul.mubr.f32.gmra.mrb[0].mxu0 %v555
  %v936 = vpop.f32.mrb[0].mxu0
  %v937 = vadd.f32 0.0, %v936
  %v938 = vpop.f32.mrb[0].mxu0
  %939 = vmatprep.mubr.f32.mxu0 0.0
  %940 = vmatmul.mubr.f32.gmra.mrb[0].mxu0 %v558
  %v941 = vpop.f32.mrb[0].mxu0
  %v942 = vadd.f32 0.0, %v941
  %v943 = vpop.f32.mrb[0].mxu0
  %944 = vmatprep.mubr.f32.mxu0 0.0
  %945 = vmatmul.mubr.f32.gmra.mrb[0].mxu0 %v561
  %v946 = vpop.f32.mrb[0].mxu0
  %v947 = vadd.f32 0.0, %v946
  %v948 = vpop.f32.mrb[0].mxu0
  %949 = vmatprep.mubr.f32.mxu0 0.0
  %950 = vmatmul.mubr.f32.gmra.mrb[0].mxu0 %v564
  %v951 = vpop.f32.mrb[0].mxu0
  %v952 = vadd.f32 0.0, %v951
  %v953 = vpop.f32.mrb[0].mxu0
  %954 = vdwg.mxu0
  %v956 = vsel %vm26, %v243, 0
  %v959 = vsel %vm26, %v244, 0
  %v962 = vsel %vm26, %v245, 0
  %v965 = vsel %vm26, %v246, 0
  %v968 = vsel %vm26, %v247, 0
  %v971 = vsel %vm26, %v248, 0
  %v974 = vsel %vm26, %v249, 0
  %v977 = vsel %vm26, %v250, 0
  %v980 = vsel %vm26, %v251, 0
  %v983 = vsel %vm26, %v252, 0
  %v986 = vsel %vm26, %v253, 0
  %v989 = vsel %vm26, %v254, 0
  %v992 = vsel %vm26, %v255, 0
  %v995 = vsel %vm26, %v256, 0
  %v998 = vsel %vm26, %v257, 0
  %v1001 = vsel %vm26, %v258, 0
  %v1004 = vsel %vm26, %v259, 0
  %v1007 = vsel %vm26, %v260, 0
  %v1010 = vsel %vm26, %v261, 0
  %v1013 = vsel %vm26, %v262, 0
  %v1016 = vsel %vm26, %v263, 0
  %v1019 = vsel %vm26, %v264, 0
  %v1022 = vsel %vm26, %v265, 0
  %v1025 = vsel %vm26, %v266, 0
  %v1028 = vsel %vm26, %v267, 0
  %v1031 = vsel %vm26, %v268, 0
  %v1034 = vsel %vm26, %v269, 0
  %v1037 = vsel %vm26, %v270, 0
  %v1040 = vsel %vm26, %v271, 0
  %v1043 = vsel %vm26, %v272, 0
  %v1046 = vsel %vm26, %v273, 0
  %v1049 = vsel %vm26, %v274, 0
  %v1052 = vsel %vm26, %v275, 0
  %v1055 = vsel %vm26, %v276, 0
  %v1058 = vsel %vm26, %v277, 0
  %v1061 = vsel %vm26, %v278, 0
  %v1064 = vsel %vm26, %v279, 0
  %v1067 = vsel %vm26, %v280, 0
  %v1070 = vsel %vm26, %v281, 0
  %v1073 = vsel %vm26, %v282, 0
  %v1076 = vsel %vm26, %v283, 0
  %v1079 = vsel %vm26, %v284, 0
  %v1082 = vsel %vm26, %v285, 0
  %v1085 = vsel %vm26, %v286, 0
  %v1088 = vsel %vm26, %v287, 0
  %v1091 = vsel %vm26, %v288, 0
  %v1094 = vsel %vm26, %v289, 0
  %v1097 = vsel %vm26, %v290, 0
  %v1100 = vsel %vm26, %v291, 0
  %v1103 = vsel %vm26, %v292, 0
  %v1106 = vsel %vm26, %v293, 0
  %v1109 = vsel %vm26, %v294, 0
  %v1112 = vsel %vm26, %v295, 0
  %v1115 = vsel %vm26, %v296, 0
  %v1118 = vsel %vm26, %v297, 0
  %v1121 = vsel %vm26, %v298, 0
  %v1124 = vsel %vm26, %v299, 0
  %v1127 = vsel %vm26, %v300, 0
  %v1130 = vsel %vm26, %v301, 0
  %v1133 = vsel %vm26, %v302, 0
  %v1136 = vsel %vm26, %v303, 0
  %v1139 = vsel %vm26, %v304, 0
  %v1142 = vsel %vm26, %v305, 0
  %v1145 = vsel %vm26, %v306, 0
  %v1148 = vsel %vm566, %v307, 0
  %1150 = vmatprep.subr.mxu0 0.0
  %1151 = vmatpush1.msra.mxu0 %v1148
  %1152 = vmatprep.subr.mxu0 0.0
  %1153 = vmatpush1.msra.mxu0 0.0
  %1154 = vmatprep.subr.mxu0 0.0
  %1155 = vmatpush1.msra.mxu0 0.0
  %1156 = vmatprep.subr.mxu0 0.0
  %1157 = vmatpush1.msra.mxu0 0.0
  %1158 = vmatprep.subr.mxu0 0.0
  %1159 = vmatpush1.msra.mxu0 0.0
  %1160 = vmatprep.subr.mxu0 0.0
  %1161 = vmatpush1.msra.mxu0 0.0
  %1162 = vmatprep.subr.mxu0 0.0
  %1163 = vmatpush1.msra.mxu0 0.0
  %1164 = vmatprep.subr.mxu0 0.0
  %1165 = vmatpush1.msra.mxu0 0.0
  %1166 = vmatprep.subr.mxu0 0.0
  %1167 = vmatpush1.msra.mxu0 0.0
  %1168 = vmatprep.subr.mxu0 0.0
  %1169 = vmatpush1.msra.mxu0 0.0
  %1170 = vmatprep.subr.mxu0 0.0
  %1171 = vmatpush1.msra.mxu0 0.0
  %1172 = vmatprep.subr.mxu0 0.0
  %1173 = vmatpush1.msra.mxu0 0.0
  %1174 = vmatprep.subr.mxu0 0.0
  %1175 = vmatpush1.msra.mxu0 0.0
  %1176 = vmatprep.subr.mxu0 0.0
  %1177 = vmatpush1.msra.mxu0 0.0
  %1178 = vmatprep.subr.mxu0 0.0
  %1179 = vmatpush1.msra.mxu0 0.0
  %1180 = vmatprep.subr.mxu0 0.0
  %1181 = vmatpush1.msra.mxu0 0.0
  %1182 = vmatprep.subr.mxu0 0.0
  %1183 = vmatpush1.msra.mxu0 0.0
  %1184 = vmatprep.subr.mxu0 0.0
  %1185 = vmatpush1.msra.mxu0 0.0
  %1186 = vmatprep.subr.mxu0 0.0
  %1187 = vmatpush1.msra.mxu0 0.0
  %1188 = vmatprep.subr.mxu0 0.0
  %1189 = vmatpush1.msra.mxu0 0.0
  %1190 = vmatprep.subr.mxu0 0.0
  %1191 = vmatpush1.msra.mxu0 0.0
  %1192 = vmatprep.subr.mxu0 0.0
  %1193 = vmatpush1.msra.mxu0 0.0
  %1194 = vmatprep.subr.mxu0 0.0
  %1195 = vmatpush1.msra.mxu0 0.0
  %1196 = vmatprep.subr.mxu0 0.0
  %1197 = vmatpush1.msra.mxu0 0.0
  %1198 = vmatprep.subr.mxu0 0.0
  %1199 = vmatpush1.msra.mxu0 0.0
  %1200 = vmatprep.subr.mxu0 0.0
  %1201 = vmatpush1.msra.mxu0 0.0
  %1202 = vmatprep.subr.mxu0 0.0
  %1203 = vmatpush1.msra.mxu0 0.0
  %1204 = vmatprep.subr.mxu0 0.0
  %1205 = vmatpush1.msra.mxu0 0.0
  %1206 = vmatprep.subr.mxu0 0.0
  %1207 = vmatpush1.msra.mxu0 0.0
  %1208 = vmatprep.subr.mxu0 0.0
  %1209 = vmatpush1.msra.mxu0 0.0
  %1210 = vmatprep.subr.mxu0 0.0
  %1211 = vmatpush1.msra.mxu0 0.0
  %1212 = vmatprep.subr.mxu0 0.0
  %1213 = vmatpush1.msra.mxu0 0.0
  %1214 = vmatprep.mubr.f32.mxu0 0.0
  %1215 = vmatmul.mubr.f32.gmra.mrb[0].mxu0 %v956
  %v1216 = vpop.f32.mrb[0].mxu0
  %v1217 = vadd.f32 %v637, %v1216
  %v1218 = vpop.f32.mrb[0].mxu0
  %1219 = vmatprep.mubr.f32.mxu0 0.0
  %1220 = vmatmul.mubr.f32.gmra.mrb[0].mxu0 %v959
  %v1221 = vpop.f32.mrb[0].mxu0
  %v1222 = vadd.f32 %v642, %v1221
  %v1223 = vpop.f32.mrb[0].mxu0
  %1224 = vmatprep.mubr.f32.mxu0 0.0
  %1225 = vmatmul.mubr.f32.gmra.mrb[0].mxu0 %v962
  %v1226 = vpop.f32.mrb[0].mxu0
  %v1227 = vadd.f32 %v647, %v1226
  %v1228 = vpop.f32.mrb[0].mxu0
  %1229 = vmatprep.mubr.f32.mxu0 0.0
  %1230 = vmatmul.mubr.f32.gmra.mrb[0].mxu0 %v965
  %v1231 = vpop.f32.mrb[0].mxu0
  %v1232 = vadd.f32 %v652, %v1231
  %v1233 = vpop.f32.mrb[0].mxu0
  %1234 = vmatprep.mubr.f32.mxu0 0.0
  %1235 = vmatmul.mubr.f32.gmra.mrb[0].mxu0 %v968
  %v1236 = vpop.f32.mrb[0].mxu0
  %v1237 = vadd.f32 %v657, %v1236
  %v1238 = vpop.f32.mrb[0].mxu0
  %1239 = vmatprep.mubr.f32.mxu0 0.0
  %1240 = vmatmul.mubr.f32.gmra.mrb[0].mxu0 %v971
  %v1241 = vpop.f32.mrb[0].mxu0
  %v1242 = vadd.f32 %v662, %v1241
  %v1243 = vpop.f32.mrb[0].mxu0
  %1244 = vmatprep.mubr.f32.mxu0 0.0
  %1245 = vmatmul.mubr.f32.gmra.mrb[0].mxu0 %v974
  %v1246 = vpop.f32.mrb[0].mxu0
  %v1247 = vadd.f32 %v667, %v1246
  %v1248 = vpop.f32.mrb[0].mxu0
  %1249 = vmatprep.mubr.f32.mxu0 0.0
  %1250 = vmatmul.mubr.f32.gmra.mrb[0].mxu0 %v977
  %v1251 = vpop.f32.mrb[0].mxu0
  %v1252 = vadd.f32 %v672, %v1251
  %v1253 = vpop.f32.mrb[0].mxu0
  %1254 = vmatprep.mubr.f32.mxu0 0.0
  %1255 = vmatmul.mubr.f32.gmra.mrb[0].mxu0 %v980
  %v1256 = vpop.f32.mrb[0].mxu0
  %v1257 = vadd.f32 %v677, %v1256
  %v1258 = vpop.f32.mrb[0].mxu0
  %1259 = vmatprep.mubr.f32.mxu0 0.0
  %1260 = vmatmul.mubr.f32.gmra.mrb[0].mxu0 %v983
  %v1261 = vpop.f32.mrb[0].mxu0
  %v1262 = vadd.f32 %v682, %v1261
  %v1263 = vpop.f32.mrb[0].mxu0
  %1264 = vmatprep.mubr.f32.mxu0 0.0
  %1265 = vmatmul.mubr.f32.gmra.mrb[0].mxu0 %v986
  %v1266 = vpop.f32.mrb[0].mxu0
  %v1267 = vadd.f32 %v687, %v1266
  %v1268 = vpop.f32.mrb[0].mxu0
  %1269 = vmatprep.mubr.f32.mxu0 0.0
  %1270 = vmatmul.mubr.f32.gmra.mrb[0].mxu0 %v989
  %v1271 = vpop.f32.mrb[0].mxu0
  %v1272 = vadd.f32 %v692, %v1271
  %v1273 = vpop.f32.mrb[0].mxu0
  %1274 = vmatprep.mubr.f32.mxu0 0.0
  %1275 = vmatmul.mubr.f32.gmra.mrb[0].mxu0 %v992
  %v1276 = vpop.f32.mrb[0].mxu0
  %v1277 = vadd.f32 %v697, %v1276
  %v1278 = vpop.f32.mrb[0].mxu0
  %1279 = vmatprep.mubr.f32.mxu0 0.0
  %1280 = vmatmul.mubr.f32.gmra.mrb[0].mxu0 %v995
  %v1281 = vpop.f32.mrb[0].mxu0
  %v1282 = vadd.f32 %v702, %v1281
  %v1283 = vpop.f32.mrb[0].mxu0
  %1284 = vmatprep.mubr.f32.mxu0 0.0
  %1285 = vmatmul.mubr.f32.gmra.mrb[0].mxu0 %v998
  %v1286 = vpop.f32.mrb[0].mxu0
  %v1287 = vadd.f32 %v707, %v1286
  %v1288 = vpop.f32.mrb[0].mxu0
  %1289 = vmatprep.mubr.f32.mxu0 0.0
  %1290 = vmatmul.mubr.f32.gmra.mrb[0].mxu0 %v1001
  %v1291 = vpop.f32.mrb[0].mxu0
  %v1292 = vadd.f32 %v712, %v1291
  %v1293 = vpop.f32.mrb[0].mxu0
  %1294 = vmatprep.mubr.f32.mxu0 0.0
  %1295 = vmatmul.mubr.f32.gmra.mrb[0].mxu0 %v1004
  %v1296 = vpop.f32.mrb[0].mxu0
  %v1297 = vadd.f32 %v717, %v1296
  %v1298 = vpop.f32.mrb[0].mxu0
  %1299 = vmatprep.mubr.f32.mxu0 0.0
  %1300 = vmatmul.mubr.f32.gmra.mrb[0].mxu0 %v1007
  %v1301 = vpop.f32.mrb[0].mxu0
  %v1302 = vadd.f32 %v722, %v1301
  %v1303 = vpop.f32.mrb[0].mxu0
  %1304 = vmatprep.mubr.f32.mxu0 0.0
  %1305 = vmatmul.mubr.f32.gmra.mrb[0].mxu0 %v1010
  %v1306 = vpop.f32.mrb[0].mxu0
  %v1307 = vadd.f32 %v727, %v1306
  %v1308 = vpop.f32.mrb[0].mxu0
  %1309 = vmatprep.mubr.f32.mxu0 0.0
  %1310 = vmatmul.mubr.f32.gmra.mrb[0].mxu0 %v1013
  %v1311 = vpop.f32.mrb[0].mxu0
  %v1312 = vadd.f32 %v732, %v1311
  %v1313 = vpop.f32.mrb[0].mxu0
  %1314 = vmatprep.mubr.f32.mxu0 0.0
  %1315 = vmatmul.mubr.f32.gmra.mrb[0].mxu0 %v1016
  %v1316 = vpop.f32.mrb[0].mxu0
  %v1317 = vadd.f32 %v737, %v1316
  %v1318 = vpop.f32.mrb[0].mxu0
  %1319 = vmatprep.mubr.f32.mxu0 0.0
  %1320 = vmatmul.mubr.f32.gmra.mrb[0].mxu0 %v1019
  %v1321 = vpop.f32.mrb[0].mxu0
  %v1322 = vadd.f32 %v742, %v1321
  %v1323 = vpop.f32.mrb[0].mxu0
  %1324 = vmatprep.mubr.f32.mxu0 0.0
  %1325 = vmatmul.mubr.f32.gmra.mrb[0].mxu0 %v1022
  %v1326 = vpop.f32.mrb[0].mxu0
  %v1327 = vadd.f32 %v747, %v1326
  %v1328 = vpop.f32.mrb[0].mxu0
  %1329 = vmatprep.mubr.f32.mxu0 0.0
  %1330 = vmatmul.mubr.f32.gmra.mrb[0].mxu0 %v1025
  %v1331 = vpop.f32.mrb[0].mxu0
  %v1332 = vadd.f32 %v752, %v1331
  %v1333 = vpop.f32.mrb[0].mxu0
  %1334 = vmatprep.mubr.f32.mxu0 0.0
  %1335 = vmatmul.mubr.f32.gmra.mrb[0].mxu0 %v1028
  %v1336 = vpop.f32.mrb[0].mxu0
  %v1337 = vadd.f32 %v757, %v1336
  %v1338 = vpop.f32.mrb[0].mxu0
  %1339 = vmatprep.mubr.f32.mxu0 0.0
  %1340 = vmatmul.mubr.f32.gmra.mrb[0].mxu0 %v1031
  %v1341 = vpop.f32.mrb[0].mxu0
  %v1342 = vadd.f32 %v762, %v1341
  %v1343 = vpop.f32.mrb[0].mxu0
  %1344 = vmatprep.mubr.f32.mxu0 0.0
  %1345 = vmatmul.mubr.f32.gmra.mrb[0].mxu0 %v1034
  %v1346 = vpop.f32.mrb[0].mxu0
  %v1347 = vadd.f32 %v767, %v1346
  %v1348 = vpop.f32.mrb[0].mxu0
  %1349 = vmatprep.mubr.f32.mxu0 0.0
  %1350 = vmatmul.mubr.f32.gmra.mrb[0].mxu0 %v1037
  %v1351 = vpop.f32.mrb[0].mxu0
  %v1352 = vadd.f32 %v772, %v1351
  %v1353 = vpop.f32.mrb[0].mxu0
  %1354 = vmatprep.mubr.f32.mxu0 0.0
  %1355 = vmatmul.mubr.f32.gmra.mrb[0].mxu0 %v1040
  %v1356 = vpop.f32.mrb[0].mxu0
  %v1357 = vadd.f32 %v777, %v1356
  %v1358 = vpop.f32.mrb[0].mxu0
  %1359 = vmatprep.mubr.f32.mxu0 0.0
  %1360 = vmatmul.mubr.f32.gmra.mrb[0].mxu0 %v1043
  %v1361 = vpop.f32.mrb[0].mxu0
  %v1362 = vadd.f32 %v782, %v1361
  %v1363 = vpop.f32.mrb[0].mxu0
  %1364 = vmatprep.mubr.f32.mxu0 0.0
  %1365 = vmatmul.mubr.f32.gmra.mrb[0].mxu0 %v1046
  %v1366 = vpop.f32.mrb[0].mxu0
  %v1367 = vadd.f32 %v787, %v1366
  %v1368 = vpop.f32.mrb[0].mxu0
  %1369 = vmatprep.mubr.f32.mxu0 0.0
  %1370 = vmatmul.mubr.f32.gmra.mrb[0].mxu0 %v1049
  %v1371 = vpop.f32.mrb[0].mxu0
  %v1372 = vadd.f32 %v792, %v1371
  %v1373 = vpop.f32.mrb[0].mxu0
  %1374 = vmatprep.mubr.f32.mxu0 0.0
  %1375 = vmatmul.mubr.f32.gmra.mrb[0].mxu0 %v1052
  %v1376 = vpop.f32.mrb[0].mxu0
  %v1377 = vadd.f32 %v797, %v1376
  %v1378 = vpop.f32.mrb[0].mxu0
  %1379 = vmatprep.mubr.f32.mxu0 0.0
  %1380 = vmatmul.mubr.f32.gmra.mrb[0].mxu0 %v1055
  %v1381 = vpop.f32.mrb[0].mxu0
  %v1382 = vadd.f32 %v802, %v1381
  %v1383 = vpop.f32.mrb[0].mxu0
  %1384 = vmatprep.mubr.f32.mxu0 0.0
  %1385 = vmatmul.mubr.f32.gmra.mrb[0].mxu0 %v1058
  %v1386 = vpop.f32.mrb[0].mxu0
  %v1387 = vadd.f32 %v807, %v1386
  %v1388 = vpop.f32.mrb[0].mxu0
  %1389 = vmatprep.mubr.f32.mxu0 0.0
  %1390 = vmatmul.mubr.f32.gmra.mrb[0].mxu0 %v1061
  %v1391 = vpop.f32.mrb[0].mxu0
  %v1392 = vadd.f32 %v812, %v1391
  %v1393 = vpop.f32.mrb[0].mxu0
  %1394 = vmatprep.mubr.f32.mxu0 0.0
  %1395 = vmatmul.mubr.f32.gmra.mrb[0].mxu0 %v1064
  %v1396 = vpop.f32.mrb[0].mxu0
  %v1397 = vadd.f32 %v817, %v1396
  %v1398 = vpop.f32.mrb[0].mxu0
  %1399 = vmatprep.mubr.f32.mxu0 0.0
  %1400 = vmatmul.mubr.f32.gmra.mrb[0].mxu0 %v1067
  %v1401 = vpop.f32.mrb[0].mxu0
  %v1402 = vadd.f32 %v822, %v1401
  %v1403 = vpop.f32.mrb[0].mxu0
  %1404 = vmatprep.mubr.f32.mxu0 0.0
  %1405 = vmatmul.mubr.f32.gmra.mrb[0].mxu0 %v1070
  %v1406 = vpop.f32.mrb[0].mxu0
  %v1407 = vadd.f32 %v827, %v1406
  %v1408 = vpop.f32.mrb[0].mxu0
  %1409 = vmatprep.mubr.f32.mxu0 0.0
  %1410 = vmatmul.mubr.f32.gmra.mrb[0].mxu0 %v1073
  %v1411 = vpop.f32.mrb[0].mxu0
  %v1412 = vadd.f32 %v832, %v1411
  %v1413 = vpop.f32.mrb[0].mxu0
  %1414 = vmatprep.mubr.f32.mxu0 0.0
  %1415 = vmatmul.mubr.f32.gmra.mrb[0].mxu0 %v1076
  %v1416 = vpop.f32.mrb[0].mxu0
  %v1417 = vadd.f32 %v837, %v1416
  %v1418 = vpop.f32.mrb[0].mxu0
  %1419 = vmatprep.mubr.f32.mxu0 0.0
  %1420 = vmatmul.mubr.f32.gmra.mrb[0].mxu0 %v1079
  %v1421 = vpop.f32.mrb[0].mxu0
  %v1422 = vadd.f32 %v842, %v1421
  %v1423 = vpop.f32.mrb[0].mxu0
  %1424 = vmatprep.mubr.f32.mxu0 0.0
  %1425 = vmatmul.mubr.f32.gmra.mrb[0].mxu0 %v1082
  %v1426 = vpop.f32.mrb[0].mxu0
  %v1427 = vadd.f32 %v847, %v1426
  %v1428 = vpop.f32.mrb[0].mxu0
  %1429 = vmatprep.mubr.f32.mxu0 0.0
  %1430 = vmatmul.mubr.f32.gmra.mrb[0].mxu0 %v1085
  %v1431 = vpop.f32.mrb[0].mxu0
  %v1432 = vadd.f32 %v852, %v1431
  %v1433 = vpop.f32.mrb[0].mxu0
  %1434 = vmatprep.mubr.f32.mxu0 0.0
  %1435 = vmatmul.mubr.f32.gmra.mrb[0].mxu0 %v1088
  %v1436 = vpop.f32.mrb[0].mxu0
  %v1437 = vadd.f32 %v857, %v1436
  %v1438 = vpop.f32.mrb[0].mxu0
  %1439 = vmatprep.mubr.f32.mxu0 0.0
  %1440 = vmatmul.mubr.f32.gmra.mrb[0].mxu0 %v1091
  %v1441 = vpop.f32.mrb[0].mxu0
  %v1442 = vadd.f32 %v862, %v1441
  %v1443 = vpop.f32.mrb[0].mxu0
  %1444 = vmatprep.mubr.f32.mxu0 0.0
  %1445 = vmatmul.mubr.f32.gmra.mrb[0].mxu0 %v1094
  %v1446 = vpop.f32.mrb[0].mxu0
  %v1447 = vadd.f32 %v867, %v1446
  %v1448 = vpop.f32.mrb[0].mxu0
  %1449 = vmatprep.mubr.f32.mxu0 0.0
  %1450 = vmatmul.mubr.f32.gmra.mrb[0].mxu0 %v1097
  %v1451 = vpop.f32.mrb[0].mxu0
  %v1452 = vadd.f32 %v872, %v1451
  %v1453 = vpop.f32.mrb[0].mxu0
  %1454 = vmatprep.mubr.f32.mxu0 0.0
  %1455 = vmatmul.mubr.f32.gmra.mrb[0].mxu0 %v1100
  %v1456 = vpop.f32.mrb[0].mxu0
  %v1457 = vadd.f32 %v877, %v1456
  %v1458 = vpop.f32.mrb[0].mxu0
  %1459 = vmatprep.mubr.f32.mxu0 0.0
  %1460 = vmatmul.mubr.f32.gmra.mrb[0].mxu0 %v1103
  %v1461 = vpop.f32.mrb[0].mxu0
  %v1462 = vadd.f32 %v882, %v1461
  %v1463 = vpop.f32.mrb[0].mxu0
  %1464 = vmatprep.mubr.f32.mxu0 0.0
  %1465 = vmatmul.mubr.f32.gmra.mrb[0].mxu0 %v1106
  %v1466 = vpop.f32.mrb[0].mxu0
  %v1467 = vadd.f32 %v887, %v1466
  %v1468 = vpop.f32.mrb[0].mxu0
  %1469 = vmatprep.mubr.f32.mxu0 0.0
  %1470 = vmatmul.mubr.f32.gmra.mrb[0].mxu0 %v1109
  %v1471 = vpop.f32.mrb[0].mxu0
  %v1472 = vadd.f32 %v892, %v1471
  %v1473 = vpop.f32.mrb[0].mxu0
  %1474 = vmatprep.mubr.f32.mxu0 0.0
  %1475 = vmatmul.mubr.f32.gmra.mrb[0].mxu0 %v1112
  %v1476 = vpop.f32.mrb[0].mxu0
  %v1477 = vadd.f32 %v897, %v1476
  %v1478 = vpop.f32.mrb[0].mxu0
  %1479 = vmatprep.mubr.f32.mxu0 0.0
  %1480 = vmatmul.mubr.f32.gmra.mrb[0].mxu0 %v1115
  %v1481 = vpop.f32.mrb[0].mxu0
  %v1482 = vadd.f32 %v902, %v1481
  %v1483 = vpop.f32.mrb[0].mxu0
  %1484 = vmatprep.mubr.f32.mxu0 0.0
  %1485 = vmatmul.mubr.f32.gmra.mrb[0].mxu0 %v1118
  %v1486 = vpop.f32.mrb[0].mxu0
  %v1487 = vadd.f32 %v907, %v1486
  %v1488 = vpop.f32.mrb[0].mxu0
  %1489 = vmatprep.mubr.f32.mxu0 0.0
  %1490 = vmatmul.mubr.f32.gmra.mrb[0].mxu0 %v1121
  %v1491 = vpop.f32.mrb[0].mxu0
  %v1492 = vadd.f32 %v912, %v1491
  %v1493 = vpop.f32.mrb[0].mxu0
  %1494 = vmatprep.mubr.f32.mxu0 0.0
  %1495 = vmatmul.mubr.f32.gmra.mrb[0].mxu0 %v1124
  %v1496 = vpop.f32.mrb[0].mxu0
  %v1497 = vadd.f32 %v917, %v1496
  %v1498 = vpop.f32.mrb[0].mxu0
  %1499 = vmatprep.mubr.f32.mxu0 0.0
  %1500 = vmatmul.mubr.f32.gmra.mrb[0].mxu0 %v1127
  %v1501 = vpop.f32.mrb[0].mxu0
  %v1502 = vadd.f32 %v922, %v1501
  %v1503 = vpop.f32.mrb[0].mxu0
  %1504 = vmatprep.mubr.f32.mxu0 0.0
  %1505 = vmatmul.mubr.f32.gmra.mrb[0].mxu0 %v1130
  %v1506 = vpop.f32.mrb[0].mxu0
  %v1507 = vadd.f32 %v927, %v1506
  %v1508 = vpop.f32.mrb[0].mxu0
  %1509 = vmatprep.mubr.f32.mxu0 0.0
  %1510 = vmatmul.mubr.f32.gmra.mrb[0].mxu0 %v1133
  %v1511 = vpop.f32.mrb[0].mxu0
  %v1512 = vadd.f32 %v932, %v1511
  %v1513 = vpop.f32.mrb[0].mxu0
  %1514 = vmatprep.mubr.f32.mxu0 0.0
  %1515 = vmatmul.mubr.f32.gmra.mrb[0].mxu0 %v1136
  %v1516 = vpop.f32.mrb[0].mxu0
  %v1517 = vadd.f32 %v937, %v1516
  %v1518 = vpop.f32.mrb[0].mxu0
  %1519 = vmatprep.mubr.f32.mxu0 0.0
  %1520 = vmatmul.mubr.f32.gmra.mrb[0].mxu0 %v1139
  %v1521 = vpop.f32.mrb[0].mxu0
  %v1522 = vadd.f32 %v942, %v1521
  %v1523 = vpop.f32.mrb[0].mxu0
  %1524 = vmatprep.mubr.f32.mxu0 0.0
  %1525 = vmatmul.mubr.f32.gmra.mrb[0].mxu0 %v1142
  %v1526 = vpop.f32.mrb[0].mxu0
  %v1527 = vadd.f32 %v947, %v1526
  %v1528 = vpop.f32.mrb[0].mxu0
  %1529 = vmatprep.mubr.f32.mxu0 0.0
  %1530 = vmatmul.mubr.f32.gmra.mrb[0].mxu0 %v1145
  %v1531 = vpop.f32.mrb[0].mxu0
  %v1532 = vadd.f32 %v952, %v1531
  %v1533 = vpop.f32.mrb[0].mxu0
  %1534 = vdwg.mxu0
  %v1535 = vld [vmem:[#allocation2 + $0x2] sm:$0xff]
  %v1536 = vld [vmem:[#allocation2 + $0xa] sm:$0xff]
  %v1537 = vld [vmem:[#allocation2 + $0x1a] sm:$0xff]
  %v1538 = vld [vmem:[#allocation2 + $0x22] sm:$0xff]
  %v1539 = vld [vmem:[#allocation2 + $0x32] sm:$0xff]
  %v1540 = vld [vmem:[#allocation2 + $0x3a] sm:$0xff]
  %v1541 = vld [vmem:[#allocation2 + $0x4a] sm:$0xff]
  %v1542 = vld [vmem:[#allocation2 + $0x52] sm:$0xff]
  %v1543 = vld [vmem:[#allocation2 + $0x62] sm:$0xff]
  %v1544 = vld [vmem:[#allocation2 + $0x6a] sm:$0xff]
  %v1545 = vld [vmem:[#allocation2 + $0x7a] sm:$0xff]
  %v1546 = vld [vmem:[#allocation2 + $0x82] sm:$0xff]
  %v1547 = vld [vmem:[#allocation2 + $0x92] sm:$0xff]
  %v1548 = vld [vmem:[#allocation2 + $0x9a] sm:$0xff]
  %v1549 = vld [vmem:[#allocation2 + $0xaa] sm:$0xff]
  %v1550 = vld [vmem:[#allocation2 + $0xb2] sm:$0xff]
  %v1551 = vld [vmem:[#allocation2 + $0xc2] sm:$0xff]
  %v1552 = vld [vmem:[#allocation2 + $0xca] sm:$0xff]
  %v1553 = vld [vmem:[#allocation2 + $0xda] sm:$0xff]
  %v1554 = vld [vmem:[#allocation2 + $0xe2] sm:$0xff]
  %v1555 = vld [vmem:[#allocation2 + $0xf2] sm:$0xff]
  %v1556 = vld [vmem:[#allocation2 + $0xfa] sm:$0xff]
  %v1557 = vld [vmem:[#allocation2 + $0x10a] sm:$0xff]
  %v1558 = vld [vmem:[#allocation2 + $0x112] sm:$0xff]
  %v1559 = vld [vmem:[#allocation2 + $0x122] sm:$0xff]
  %v1560 = vld [vmem:[#allocation2 + $0x12a] sm:$0xff]
  %v1561 = vld [vmem:[#allocation2 + $0x13a] sm:$0xff]
  %v1562 = vld [vmem:[#allocation2 + $0x142] sm:$0xff]
  %v1563 = vld [vmem:[#allocation2 + $0x152] sm:$0xff]
  %v1564 = vld [vmem:[#allocation2 + $0x15a] sm:$0xff]
  %v1565 = vld [vmem:[#allocation2 + $0x16a] sm:$0xff]
  %v1566 = vld [vmem:[#allocation2 + $0x172] sm:$0xff]
  %v1567 = vld [vmem:[#allocation2 + $0x1b2] sm:$0xff]
  %v1568 = vld [vmem:[#allocation2 + $0x1ba] sm:$0xff]
  %v1569 = vld [vmem:[#allocation2 + $0x1ca] sm:$0xff]
  %v1570 = vld [vmem:[#allocation2 + $0x1d2] sm:$0xff]
  %v1571 = vld [vmem:[#allocation2 + $0x1e2] sm:$0xff]
  %v1572 = vld [vmem:[#allocation2 + $0x1ea] sm:$0xff]
  %v1573 = vld [vmem:[#allocation2 + $0x1fa] sm:$0xff]
  %v1574 = vld [vmem:[#allocation2 + $0x202] sm:$0xff]
  %v1575 = vld [vmem:[#allocation2 + $0x212] sm:$0xff]
  %v1576 = vld [vmem:[#allocation2 + $0x21a] sm:$0xff]
  %v1577 = vld [vmem:[#allocation2 + $0x22a] sm:$0xff]
  %v1578 = vld [vmem:[#allocation2 + $0x232] sm:$0xff]
  %v1579 = vld [vmem:[#allocation2 + $0x242] sm:$0xff]
  %v1580 = vld [vmem:[#allocation2 + $0x24a] sm:$0xff]
  %v1581 = vld [vmem:[#allocation2 + $0x25a] sm:$0xff]
  %v1582 = vld [vmem:[#allocation2 + $0x262] sm:$0xff]
  %v1583 = vld [vmem:[#allocation2 + $0x272] sm:$0xff]
  %v1584 = vld [vmem:[#allocation2 + $0x27a] sm:$0xff]
  %v1585 = vld [vmem:[#allocation2 + $0x28a] sm:$0xff]
  %v1586 = vld [vmem:[#allocation2 + $0x292] sm:$0xff]
  %v1587 = vld [vmem:[#allocation2 + $0x2a2] sm:$0xff]
  %v1588 = vld [vmem:[#allocation2 + $0x2aa] sm:$0xff]
  %v1589 = vld [vmem:[#allocation2 + $0x2ba] sm:$0xff]
  %v1590 = vld [vmem:[#allocation2 + $0x2c2] sm:$0xff]
  %v1591 = vld [vmem:[#allocation2 + $0x2d2] sm:$0xff]
  %v1592 = vld [vmem:[#allocation2 + $0x2da] sm:$0xff]
  %v1593 = vld [vmem:[#allocation2 + $0x2ea] sm:$0xff]
  %v1594 = vld [vmem:[#allocation2 + $0x2f2] sm:$0xff]
  %v1595 = vld [vmem:[#allocation2 + $0x302] sm:$0xff]
  %v1596 = vld [vmem:[#allocation2 + $0x30a] sm:$0xff]
  %v1597 = vld [vmem:[#allocation2 + $0x31a] sm:$0xff]
  %v1598 = vld [vmem:[#allocation2 + $0x322] sm:$0xff]
  %s1599 = scalar_lea.vmem %s1, 8
  %v1600 = vld [vmem:[%s1599] sm:$0xf]
  %v1602 = vsel %vm26, %v1535, 0
  %v1605 = vsel %vm26, %v1536, 0
  %v1608 = vsel %vm26, %v1537, 0
  %v1611 = vsel %vm26, %v1538, 0
  %v1614 = vsel %vm26, %v1539, 0
  %v1617 = vsel %vm26, %v1540, 0
  %v1620 = vsel %vm26, %v1541, 0
  %v1623 = vsel %vm26, %v1542, 0
  %v1626 = vsel %vm26, %v1543, 0
  %v1629 = vsel %vm26, %v1544, 0
  %v1632 = vsel %vm26, %v1545, 0
  %v1635 = vsel %vm26, %v1546, 0
  %v1638 = vsel %vm26, %v1547, 0
  %v1641 = vsel %vm26, %v1548, 0
  %v1644 = vsel %vm26, %v1549, 0
  %v1647 = vsel %vm26, %v1550, 0
  %v1650 = vsel %vm26, %v1551, 0
  %v1653 = vsel %vm26, %v1552, 0
  %v1656 = vsel %vm26, %v1553, 0
  %v1659 = vsel %vm26, %v1554, 0
  %v1662 = vsel %vm26, %v1555, 0
  %v1665 = vsel %vm26, %v1556, 0
  %v1668 = vsel %vm26, %v1557, 0
  %v1671 = vsel %vm26, %v1558, 0
  %v1674 = vsel %vm26, %v1559, 0
  %v1677 = vsel %vm26, %v1560, 0
  %v1680 = vsel %vm26, %v1561, 0
  %v1683 = vsel %vm26, %v1562, 0
  %v1686 = vsel %vm26, %v1563, 0
  %v1689 = vsel %vm26, %v1564, 0
  %v1692 = vsel %vm26, %v1565, 0
  %v1695 = vsel %vm26, %v1566, 0
  %v1698 = vsel %vm26, %v1567, 0
  %v1701 = vsel %vm26, %v1568, 0
  %v1704 = vsel %vm26, %v1569, 0
  %v1707 = vsel %vm26, %v1570, 0
  %v1710 = vsel %vm26, %v1571, 0
  %v1713 = vsel %vm26, %v1572, 0
  %v1716 = vsel %vm26, %v1573, 0
  %v1719 = vsel %vm26, %v1574, 0
  %v1722 = vsel %vm26, %v1575, 0
  %v1725 = vsel %vm26, %v1576, 0
  %v1728 = vsel %vm26, %v1577, 0
  %v1731 = vsel %vm26, %v1578, 0
  %v1734 = vsel %vm26, %v1579, 0
  %v1737 = vsel %vm26, %v1580, 0
  %v1740 = vsel %vm26, %v1581, 0
  %v1743 = vsel %vm26, %v1582, 0
  %v1746 = vsel %vm26, %v1583, 0
  %v1749 = vsel %vm26, %v1584, 0
  %v1752 = vsel %vm26, %v1585, 0
  %v1755 = vsel %vm26, %v1586, 0
  %v1758 = vsel %vm26, %v1587, 0
  %v1761 = vsel %vm26, %v1588, 0
  %v1764 = vsel %vm26, %v1589, 0
  %v1767 = vsel %vm26, %v1590, 0
  %v1770 = vsel %vm26, %v1591, 0
  %v1773 = vsel %vm26, %v1592, 0
  %v1776 = vsel %vm26, %v1593, 0
  %v1779 = vsel %vm26, %v1594, 0
  %v1782 = vsel %vm26, %v1595, 0
  %v1785 = vsel %vm26, %v1596, 0
  %v1788 = vsel %vm26, %v1597, 0
  %v1791 = vsel %vm26, %v1598, 0
  %v1794 = vsel %vm566, %v1600, 0
  %1796 = vmatprep.subr.mxu0 0.0
  %1797 = vmatpush1.msra.mxu0 %v1794
  %1798 = vmatprep.subr.mxu0 0.0
  %1799 = vmatpush1.msra.mxu0 0.0
  %1800 = vmatprep.subr.mxu0 0.0
  %1801 = vmatpush1.msra.mxu0 0.0
  %1802 = vmatprep.subr.mxu0 0.0
  %1803 = vmatpush1.msra.mxu0 0.0
  %1804 = vmatprep.subr.mxu0 0.0
  %1805 = vmatpush1.msra.mxu0 0.0
  %1806 = vmatprep.subr.mxu0 0.0
  %1807 = vmatpush1.msra.mxu0 0.0
  %1808 = vmatprep.subr.mxu0 0.0
  %1809 = vmatpush1.msra.mxu0 0.0
  %1810 = vmatprep.subr.mxu0 0.0
  %1811 = vmatpush1.msra.mxu0 0.0
  %1812 = vmatprep.subr.mxu0 0.0
  %1813 = vmatpush1.msra.mxu0 0.0
  %1814 = vmatprep.subr.mxu0 0.0
  %1815 = vmatpush1.msra.mxu0 0.0
  %1816 = vmatprep.subr.mxu0 0.0
  %1817 = vmatpush1.msra.mxu0 0.0
  %1818 = vmatprep.subr.mxu0 0.0
  %1819 = vmatpush1.msra.mxu0 0.0
  %1820 = vmatprep.subr.mxu0 0.0
  %1821 = vmatpush1.msra.mxu0 0.0
  %1822 = vmatprep.subr.mxu0 0.0
  %1823 = vmatpush1.msra.mxu0 0.0
  %1824 = vmatprep.subr.mxu0 0.0
  %1825 = vmatpush1.msra.mxu0 0.0
  %1826 = vmatprep.subr.mxu0 0.0
  %1827 = vmatpush1.msra.mxu0 0.0
  %1828 = vmatprep.subr.mxu0 0.0
  %1829 = vmatpush1.msra.mxu0 0.0
  %1830 = vmatprep.subr.mxu0 0.0
  %1831 = vmatpush1.msra.mxu0 0.0
  %1832 = vmatprep.subr.mxu0 0.0
  %1833 = vmatpush1.msra.mxu0 0.0
  %1834 = vmatprep.subr.mxu0 0.0
  %1835 = vmatpush1.msra.mxu0 0.0
  %1836 = vmatprep.subr.mxu0 0.0
  %1837 = vmatpush1.msra.mxu0 0.0
  %1838 = vmatprep.subr.mxu0 0.0
  %1839 = vmatpush1.msra.mxu0 0.0
  %1840 = vmatprep.subr.mxu0 0.0
  %1841 = vmatpush1.msra.mxu0 0.0
  %1842 = vmatprep.subr.mxu0 0.0
  %1843 = vmatpush1.msra.mxu0 0.0
  %1844 = vmatprep.subr.mxu0 0.0
  %1845 = vmatpush1.msra.mxu0 0.0
  %1846 = vmatprep.subr.mxu0 0.0
  %1847 = vmatpush1.msra.mxu0 0.0
  %1848 = vmatprep.subr.mxu0 0.0
  %1849 = vmatpush1.msra.mxu0 0.0
  %1850 = vmatprep.subr.mxu0 0.0
  %1851 = vmatpush1.msra.mxu0 0.0
  %1852 = vmatprep.subr.mxu0 0.0
  %1853 = vmatpush1.msra.mxu0 0.0
  %1854 = vmatprep.subr.mxu0 0.0
  %1855 = vmatpush1.msra.mxu0 0.0
  %1856 = vmatprep.subr.mxu0 0.0
  %1857 = vmatpush1.msra.mxu0 0.0
  %1858 = vmatprep.subr.mxu0 0.0
  %1859 = vmatpush1.msra.mxu0 0.0
  %1860 = vmatprep.mubr.f32.mxu0 0.0
  %1861 = vmatmul.mubr.f32.gmra.mrb[0].mxu0 %v1602
  %v1862 = vpop.f32.mrb[0].mxu0
  %v1863 = vadd.f32 0.0, %v1862
  %v1864 = vpop.f32.mrb[0].mxu0
  %1865 = vmatprep.mubr.f32.mxu0 0.0
  %1866 = vmatmul.mubr.f32.gmra.mrb[0].mxu0 %v1605
  %v1867 = vpop.f32.mrb[0].mxu0
  %v1868 = vadd.f32 0.0, %v1867
  %v1869 = vpop.f32.mrb[0].mxu0
  %1870 = vmatprep.mubr.f32.mxu0 0.0
  %1871 = vmatmul.mubr.f32.gmra.mrb[0].mxu0 %v1608
  %v1872 = vpop.f32.mrb[0].mxu0
  %v1873 = vadd.f32 0.0, %v1872
  %v1874 = vpop.f32.mrb[0].mxu0
  %1875 = vmatprep.mubr.f32.mxu0 0.0
  %1876 = vmatmul.mubr.f32.gmra.mrb[0].mxu0 %v1611
  %v1877 = vpop.f32.mrb[0].mxu0
  %v1878 = vadd.f32 0.0, %v1877
  %v1879 = vpop.f32.mrb[0].mxu0
  %1880 = vmatprep.mubr.f32.mxu0 0.0
  %1881 = vmatmul.mubr.f32.gmra.mrb[0].mxu0 %v1614
  %v1882 = vpop.f32.mrb[0].mxu0
  %v1883 = vadd.f32 0.0, %v1882
  %v1884 = vpop.f32.mrb[0].mxu0
  %1885 = vmatprep.mubr.f32.mxu0 0.0
  %1886 = vmatmul.mubr.f32.gmra.mrb[0].mxu0 %v1617
  %v1887 = vpop.f32.mrb[0].mxu0
  %v1888 = vadd.f32 0.0, %v1887
  %v1889 = vpop.f32.mrb[0].mxu0
  %1890 = vmatprep.mubr.f32.mxu0 0.0
  %1891 = vmatmul.mubr.f32.gmra.mrb[0].mxu0 %v1620
  %v1892 = vpop.f32.mrb[0].mxu0
  %v1893 = vadd.f32 0.0, %v1892
  %v1894 = vpop.f32.mrb[0].mxu0
  %1895 = vmatprep.mubr.f32.mxu0 0.0
  %1896 = vmatmul.mubr.f32.gmra.mrb[0].mxu0 %v1623
  %v1897 = vpop.f32.mrb[0].mxu0
  %v1898 = vadd.f32 0.0, %v1897
  %v1899 = vpop.f32.mrb[0].mxu0
  %1900 = vmatprep.mubr.f32.mxu0 0.0
  %1901 = vmatmul.mubr.f32.gmra.mrb[0].mxu0 %v1626
  %v1902 = vpop.f32.mrb[0].mxu0
  %v1903 = vadd.f32 0.0, %v1902
  %v1904 = vpop.f32.mrb[0].mxu0
  %1905 = vmatprep.mubr.f32.mxu0 0.0
  %1906 = vmatmul.mubr.f32.gmra.mrb[0].mxu0 %v1629
  %v1907 = vpop.f32.mrb[0].mxu0
  %v1908 = vadd.f32 0.0, %v1907
  %v1909 = vpop.f32.mrb[0].mxu0
  %1910 = vmatprep.mubr.f32.mxu0 0.0
  %1911 = vmatmul.mubr.f32.gmra.mrb[0].mxu0 %v1632
  %v1912 = vpop.f32.mrb[0].mxu0
  %v1913 = vadd.f32 0.0, %v1912
  %v1914 = vpop.f32.mrb[0].mxu0
  %1915 = vmatprep.mubr.f32.mxu0 0.0
  %1916 = vmatmul.mubr.f32.gmra.mrb[0].mxu0 %v1635
  %v1917 = vpop.f32.mrb[0].mxu0
  %v1918 = vadd.f32 0.0, %v1917
  %v1919 = vpop.f32.mrb[0].mxu0
  %1920 = vmatprep.mubr.f32.mxu0 0.0
  %1921 = vmatmul.mubr.f32.gmra.mrb[0].mxu0 %v1638
  %v1922 = vpop.f32.mrb[0].mxu0
  %v1923 = vadd.f32 0.0, %v1922
  %v1924 = vpop.f32.mrb[0].mxu0
  %1925 = vmatprep.mubr.f32.mxu0 0.0
  %1926 = vmatmul.mubr.f32.gmra.mrb[0].mxu0 %v1641
  %v1927 = vpop.f32.mrb[0].mxu0
  %v1928 = vadd.f32 0.0, %v1927
  %v1929 = vpop.f32.mrb[0].mxu0
  %1930 = vmatprep.mubr.f32.mxu0 0.0
  %1931 = vmatmul.mubr.f32.gmra.mrb[0].mxu0 %v1644
  %v1932 = vpop.f32.mrb[0].mxu0
  %v1933 = vadd.f32 0.0, %v1932
  %v1934 = vpop.f32.mrb[0].mxu0
  %1935 = vmatprep.mubr.f32.mxu0 0.0
  %1936 = vmatmul.mubr.f32.gmra.mrb[0].mxu0 %v1647
  %v1937 = vpop.f32.mrb[0].mxu0
  %v1938 = vadd.f32 0.0, %v1937
  %v1939 = vpop.f32.mrb[0].mxu0
  %1940 = vmatprep.mubr.f32.mxu0 0.0
  %1941 = vmatmul.mubr.f32.gmra.mrb[0].mxu0 %v1650
  %v1942 = vpop.f32.mrb[0].mxu0
  %v1943 = vadd.f32 0.0, %v1942
  %v1944 = vpop.f32.mrb[0].mxu0
  %1945 = vmatprep.mubr.f32.mxu0 0.0
  %1946 = vmatmul.mubr.f32.gmra.mrb[0].mxu0 %v1653
  %v1947 = vpop.f32.mrb[0].mxu0
  %v1948 = vadd.f32 0.0, %v1947
  %v1949 = vpop.f32.mrb[0].mxu0
  %1950 = vmatprep.mubr.f32.mxu0 0.0
  %1951 = vmatmul.mubr.f32.gmra.mrb[0].mxu0 %v1656
  %v1952 = vpop.f32.mrb[0].mxu0
  %v1953 = vadd.f32 0.0, %v1952
  %v1954 = vpop.f32.mrb[0].mxu0
  %1955 = vmatprep.mubr.f32.mxu0 0.0
  %1956 = vmatmul.mubr.f32.gmra.mrb[0].mxu0 %v1659
  %v1957 = vpop.f32.mrb[0].mxu0
  %v1958 = vadd.f32 0.0, %v1957
  %v1959 = vpop.f32.mrb[0].mxu0
  %1960 = vmatprep.mubr.f32.mxu0 0.0
  %1961 = vmatmul.mubr.f32.gmra.mrb[0].mxu0 %v1662
  %v1962 = vpop.f32.mrb[0].mxu0
  %v1963 = vadd.f32 0.0, %v1962
  %v1964 = vpop.f32.mrb[0].mxu0
  %1965 = vmatprep.mubr.f32.mxu0 0.0
  %1966 = vmatmul.mubr.f32.gmra.mrb[0].mxu0 %v1665
  %v1967 = vpop.f32.mrb[0].mxu0
  %v1968 = vadd.f32 0.0, %v1967
  %v1969 = vpop.f32.mrb[0].mxu0
  %1970 = vmatprep.mubr.f32.mxu0 0.0
  %1971 = vmatmul.mubr.f32.gmra.mrb[0].mxu0 %v1668
  %v1972 = vpop.f32.mrb[0].mxu0
  %v1973 = vadd.f32 0.0, %v1972
  %v1974 = vpop.f32.mrb[0].mxu0
  %1975 = vmatprep.mubr.f32.mxu0 0.0
  %1976 = vmatmul.mubr.f32.gmra.mrb[0].mxu0 %v1671
  %v1977 = vpop.f32.mrb[0].mxu0
  %v1978 = vadd.f32 0.0, %v1977
  %v1979 = vpop.f32.mrb[0].mxu0
  %1980 = vmatprep.mubr.f32.mxu0 0.0
  %1981 = vmatmul.mubr.f32.gmra.mrb[0].mxu0 %v1674
  %v1982 = vpop.f32.mrb[0].mxu0
  %v1983 = vadd.f32 0.0, %v1982
  %v1984 = vpop.f32.mrb[0].mxu0
  %1985 = vmatprep.mubr.f32.mxu0 0.0
  %1986 = vmatmul.mubr.f32.gmra.mrb[0].mxu0 %v1677
  %v1987 = vpop.f32.mrb[0].mxu0
  %v1988 = vadd.f32 0.0, %v1987
  %v1989 = vpop.f32.mrb[0].mxu0
  %1990 = vmatprep.mubr.f32.mxu0 0.0
  %1991 = vmatmul.mubr.f32.gmra.mrb[0].mxu0 %v1680
  %v1992 = vpop.f32.mrb[0].mxu0
  %v1993 = vadd.f32 0.0, %v1992
  %v1994 = vpop.f32.mrb[0].mxu0
  %1995 = vmatprep.mubr.f32.mxu0 0.0
  %1996 = vmatmul.mubr.f32.gmra.mrb[0].mxu0 %v1683
  %v1997 = vpop.f32.mrb[0].mxu0
  %v1998 = vadd.f32 0.0, %v1997
  %v1999 = vpop.f32.mrb[0].mxu0
  %2000 = vmatprep.mubr.f32.mxu0 0.0
  %2001 = vmatmul.mubr.f32.gmra.mrb[0].mxu0 %v1686
  %v2002 = vpop.f32.mrb[0].mxu0
  %v2003 = vadd.f32 0.0, %v2002
  %v2004 = vpop.f32.mrb[0].mxu0
  %2005 = vmatprep.mubr.f32.mxu0 0.0
  %2006 = vmatmul.mubr.f32.gmra.mrb[0].mxu0 %v1689
  %v2007 = vpop.f32.mrb[0].mxu0
  %v2008 = vadd.f32 0.0, %v2007
  %v2009 = vpop.f32.mrb[0].mxu0
  %2010 = vmatprep.mubr.f32.mxu0 0.0
  %2011 = vmatmul.mubr.f32.gmra.mrb[0].mxu0 %v1692
  %v2012 = vpop.f32.mrb[0].mxu0
  %v2013 = vadd.f32 0.0, %v2012
  %v2014 = vpop.f32.mrb[0].mxu0
  %2015 = vmatprep.mubr.f32.mxu0 0.0
  %2016 = vmatmul.mubr.f32.gmra.mrb[0].mxu0 %v1695
  %v2017 = vpop.f32.mrb[0].mxu0
  %v2018 = vadd.f32 0.0, %v2017
  %v2019 = vpop.f32.mrb[0].mxu0
  %2020 = vmatprep.mubr.f32.mxu0 0.0
  %2021 = vmatmul.mubr.f32.gmra.mrb[0].mxu0 %v1698
  %v2022 = vpop.f32.mrb[0].mxu0
  %v2023 = vadd.f32 0.0, %v2022
  %v2024 = vpop.f32.mrb[0].mxu0
  %2025 = vmatprep.mubr.f32.mxu0 0.0
  %2026 = vmatmul.mubr.f32.gmra.mrb[0].mxu0 %v1701
  %v2027 = vpop.f32.mrb[0].mxu0
  %v2028 = vadd.f32 0.0, %v2027
  %v2029 = vpop.f32.mrb[0].mxu0
  %2030 = vmatprep.mubr.f32.mxu0 0.0
  %2031 = vmatmul.mubr.f32.gmra.mrb[0].mxu0 %v1704
  %v2032 = vpop.f32.mrb[0].mxu0
  %v2033 = vadd.f32 0.0, %v2032
  %v2034 = vpop.f32.mrb[0].mxu0
  %2035 = vmatprep.mubr.f32.mxu0 0.0
  %2036 = vmatmul.mubr.f32.gmra.mrb[0].mxu0 %v1707
  %v2037 = vpop.f32.mrb[0].mxu0
  %v2038 = vadd.f32 0.0, %v2037
  %v2039 = vpop.f32.mrb[0].mxu0
  %2040 = vmatprep.mubr.f32.mxu0 0.0
  %2041 = vmatmul.mubr.f32.gmra.mrb[0].mxu0 %v1710
  %v2042 = vpop.f32.mrb[0].mxu0
  %v2043 = vadd.f32 0.0, %v2042
  %v2044 = vpop.f32.mrb[0].mxu0
  %2045 = vmatprep.mubr.f32.mxu0 0.0
  %2046 = vmatmul.mubr.f32.gmra.mrb[0].mxu0 %v1713
  %v2047 = vpop.f32.mrb[0].mxu0
  %v2048 = vadd.f32 0.0, %v2047
  %v2049 = vpop.f32.mrb[0].mxu0
  %2050 = vmatprep.mubr.f32.mxu0 0.0
  %2051 = vmatmul.mubr.f32.gmra.mrb[0].mxu0 %v1716
  %v2052 = vpop.f32.mrb[0].mxu0
  %v2053 = vadd.f32 0.0, %v2052
  %v2054 = vpop.f32.mrb[0].mxu0
  %2055 = vmatprep.mubr.f32.mxu0 0.0
  %2056 = vmatmul.mubr.f32.gmra.mrb[0].mxu0 %v1719
  %v2057 = vpop.f32.mrb[0].mxu0
  %v2058 = vadd.f32 0.0, %v2057
  %v2059 = vpop.f32.mrb[0].mxu0
  %2060 = vmatprep.mubr.f32.mxu0 0.0
  %2061 = vmatmul.mubr.f32.gmra.mrb[0].mxu0 %v1722
  %v2062 = vpop.f32.mrb[0].mxu0
  %v2063 = vadd.f32 0.0, %v2062
  %v2064 = vpop.f32.mrb[0].mxu0
  %2065 = vmatprep.mubr.f32.mxu0 0.0
  %2066 = vmatmul.mubr.f32.gmra.mrb[0].mxu0 %v1725
  %v2067 = vpop.f32.mrb[0].mxu0
  %v2068 = vadd.f32 0.0, %v2067
  %v2069 = vpop.f32.mrb[0].mxu0
  %2070 = vmatprep.mubr.f32.mxu0 0.0
  %2071 = vmatmul.mubr.f32.gmra.mrb[0].mxu0 %v1728
  %v2072 = vpop.f32.mrb[0].mxu0
  %v2073 = vadd.f32 0.0, %v2072
  %v2074 = vpop.f32.mrb[0].mxu0
  %2075 = vmatprep.mubr.f32.mxu0 0.0
  %2076 = vmatmul.mubr.f32.gmra.mrb[0].mxu0 %v1731
  %v2077 = vpop.f32.mrb[0].mxu0
  %v2078 = vadd.f32 0.0, %v2077
  %v2079 = vpop.f32.mrb[0].mxu0
  %2080 = vmatprep.mubr.f32.mxu0 0.0
  %2081 = vmatmul.mubr.f32.gmra.mrb[0].mxu0 %v1734
  %v2082 = vpop.f32.mrb[0].mxu0
  %v2083 = vadd.f32 0.0, %v2082
  %v2084 = vpop.f32.mrb[0].mxu0
  %2085 = vmatprep.mubr.f32.mxu0 0.0
  %2086 = vmatmul.mubr.f32.gmra.mrb[0].mxu0 %v1737
  %v2087 = vpop.f32.mrb[0].mxu0
  %v2088 = vadd.f32 0.0, %v2087
  %v2089 = vpop.f32.mrb[0].mxu0
  %2090 = vmatprep.mubr.f32.mxu0 0.0
  %2091 = vmatmul.mubr.f32.gmra.mrb[0].mxu0 %v1740
  %v2092 = vpop.f32.mrb[0].mxu0
  %v2093 = vadd.f32 0.0, %v2092
  %v2094 = vpop.f32.mrb[0].mxu0
  %2095 = vmatprep.mubr.f32.mxu0 0.0
  %2096 = vmatmul.mubr.f32.gmra.mrb[0].mxu0 %v1743
  %v2097 = vpop.f32.mrb[0].mxu0
  %v2098 = vadd.f32 0.0, %v2097
  %v2099 = vpop.f32.mrb[0].mxu0
  %2100 = vmatprep.mubr.f32.mxu0 0.0
  %2101 = vmatmul.mubr.f32.gmra.mrb[0].mxu0 %v1746
  %v2102 = vpop.f32.mrb[0].mxu0
  %v2103 = vadd.f32 0.0, %v2102
  %v2104 = vpop.f32.mrb[0].mxu0
  %2105 = vmatprep.mubr.f32.mxu0 0.0
  %2106 = vmatmul.mubr.f32.gmra.mrb[0].mxu0 %v1749
  %v2107 = vpop.f32.mrb[0].mxu0
  %v2108 = vadd.f32 0.0, %v2107
  %v2109 = vpop.f32.mrb[0].mxu0
  %2110 = vmatprep.mubr.f32.mxu0 0.0
  %2111 = vmatmul.mubr.f32.gmra.mrb[0].mxu0 %v1752
  %v2112 = vpop.f32.mrb[0].mxu0
  %v2113 = vadd.f32 0.0, %v2112
  %v2114 = vpop.f32.mrb[0].mxu0
  %2115 = vmatprep.mubr.f32.mxu0 0.0
  %2116 = vmatmul.mubr.f32.gmra.mrb[0].mxu0 %v1755
  %v2117 = vpop.f32.mrb[0].mxu0
  %v2118 = vadd.f32 0.0, %v2117
  %v2119 = vpop.f32.mrb[0].mxu0
  %2120 = vmatprep.mubr.f32.mxu0 0.0
  %2121 = vmatmul.mubr.f32.gmra.mrb[0].mxu0 %v1758
  %v2122 = vpop.f32.mrb[0].mxu0
  %v2123 = vadd.f32 0.0, %v2122
  %v2124 = vpop.f32.mrb[0].mxu0
  %2125 = vmatprep.mubr.f32.mxu0 0.0
  %2126 = vmatmul.mubr.f32.gmra.mrb[0].mxu0 %v1761
  %v2127 = vpop.f32.mrb[0].mxu0
  %v2128 = vadd.f32 0.0, %v2127
  %v2129 = vpop.f32.mrb[0].mxu0
  %2130 = vmatprep.mubr.f32.mxu0 0.0
  %2131 = vmatmul.mubr.f32.gmra.mrb[0].mxu0 %v1764
  %v2132 = vpop.f32.mrb[0].mxu0
  %v2133 = vadd.f32 0.0, %v2132
  %v2134 = vpop.f32.mrb[0].mxu0
  %2135 = vmatprep.mubr.f32.mxu0 0.0
  %2136 = vmatmul.mubr.f32.gmra.mrb[0].mxu0 %v1767
  %v2137 = vpop.f32.mrb[0].mxu0
  %v2138 = vadd.f32 0.0, %v2137
  %v2139 = vpop.f32.mrb[0].mxu0
  %2140 = vmatprep.mubr.f32.mxu0 0.0
  %2141 = vmatmul.mubr.f32.gmra.mrb[0].mxu0 %v1770
  %v2142 = vpop.f32.mrb[0].mxu0
  %v2143 = vadd.f32 0.0, %v2142
  %v2144 = vpop.f32.mrb[0].mxu0
  %2145 = vmatprep.mubr.f32.mxu0 0.0
  %2146 = vmatmul.mubr.f32.gmra.mrb[0].mxu0 %v1773
  %v2147 = vpop.f32.mrb[0].mxu0
  %v2148 = vadd.f32 0.0, %v2147
  %v2149 = vpop.f32.mrb[0].mxu0
  %2150 = vmatprep.mubr.f32.mxu0 0.0
  %2151 = vmatmul.mubr.f32.gmra.mrb[0].mxu0 %v1776
  %v2152 = vpop.f32.mrb[0].mxu0
  %v2153 = vadd.f32 0.0, %v2152
  %v2154 = vpop.f32.mrb[0].mxu0
  %2155 = vmatprep.mubr.f32.mxu0 0.0
  %2156 = vmatmul.mubr.f32.gmra.mrb[0].mxu0 %v1779
  %v2157 = vpop.f32.mrb[0].mxu0
  %v2158 = vadd.f32 0.0, %v2157
  %v2159 = vpop.f32.mrb[0].mxu0
  %2160 = vmatprep.mubr.f32.mxu0 0.0
  %2161 = vmatmul.mubr.f32.gmra.mrb[0].mxu0 %v1782
  %v2162 = vpop.f32.mrb[0].mxu0
  %v2163 = vadd.f32 0.0, %v2162
  %v2164 = vpop.f32.mrb[0].mxu0
  %2165 = vmatprep.mubr.f32.mxu0 0.0
  %2166 = vmatmul.mubr.f32.gmra.mrb[0].mxu0 %v1785
  %v2167 = vpop.f32.mrb[0].mxu0
  %v2168 = vadd.f32 0.0, %v2167
  %v2169 = vpop.f32.mrb[0].mxu0
  %2170 = vmatprep.mubr.f32.mxu0 0.0
  %2171 = vmatmul.mubr.f32.gmra.mrb[0].mxu0 %v1788
  %v2172 = vpop.f32.mrb[0].mxu0
  %v2173 = vadd.f32 0.0, %v2172
  %v2174 = vpop.f32.mrb[0].mxu0
  %2175 = vmatprep.mubr.f32.mxu0 0.0
  %2176 = vmatmul.mubr.f32.gmra.mrb[0].mxu0 %v1791
  %v2177 = vpop.f32.mrb[0].mxu0
  %v2178 = vadd.f32 0.0, %v2177
  %v2179 = vpop.f32.mrb[0].mxu0
  %2180 = vdwg.mxu0
  %v2181 = vadd.f32 %v1217, %v1863
  %v2182 = vadd.f32 %v1222, %v1868
  %v2183 = vadd.f32 %v1227, %v1873
  %v2184 = vadd.f32 %v1232, %v1878
  %v2185 = vadd.f32 %v1237, %v1883
  %v2186 = vadd.f32 %v1242, %v1888
  %v2187 = vadd.f32 %v1247, %v1893
  %v2188 = vadd.f32 %v1252, %v1898
  %v2189 = vadd.f32 %v1257, %v1903
  %v2190 = vadd.f32 %v1262, %v1908
  %v2191 = vadd.f32 %v1267, %v1913
  %v2192 = vadd.f32 %v1272, %v1918
  %v2193 = vadd.f32 %v1277, %v1923
  %v2194 = vadd.f32 %v1282, %v1928
  %v2195 = vadd.f32 %v1287, %v1933
  %v2196 = vadd.f32 %v1292, %v1938
  %v2197 = vadd.f32 %v1297, %v1943
  %v2198 = vadd.f32 %v1302, %v1948
  %v2199 = vadd.f32 %v1307, %v1953
  %v2200 = vadd.f32 %v1312, %v1958
  %v2201 = vadd.f32 %v1317, %v1963
  %v2202 = vadd.f32 %v1322, %v1968
  %v2203 = vadd.f32 %v1327, %v1973
  %v2204 = vadd.f32 %v1332, %v1978
  %v2205 = vadd.f32 %v1337, %v1983
  %v2206 = vadd.f32 %v1342, %v1988
  %v2207 = vadd.f32 %v1347, %v1993
  %v2208 = vadd.f32 %v1352, %v1998
  %v2209 = vadd.f32 %v1357, %v2003
  %v2210 = vadd.f32 %v1362, %v2008
  %v2211 = vadd.f32 %v1367, %v2013
  %v2212 = vadd.f32 %v1372, %v2018
  %v2213 = vadd.f32 %v1377, %v2023
  %v2214 = vadd.f32 %v1382, %v2028
  %v2215 = vadd.f32 %v1387, %v2033
  %v2216 = vadd.f32 %v1392, %v2038
  %v2217 = vadd.f32 %v1397, %v2043
  %v2218 = vadd.f32 %v1402, %v2048
  %v2219 = vadd.f32 %v1407, %v2053
  %v2220 = vadd.f32 %v1412, %v2058
  %v2221 = vadd.f32 %v1417, %v2063
  %v2222 = vadd.f32 %v1422, %v2068
  %v2223 = vadd.f32 %v1427, %v2073
  %v2224 = vadd.f32 %v1432, %v2078
  %v2225 = vadd.f32 %v1437, %v2083
  %v2226 = vadd.f32 %v1442, %v2088
  %v2227 = vadd.f32 %v1447, %v2093
  %v2228 = vadd.f32 %v1452, %v2098
  %v2229 = vadd.f32 %v1457, %v2103
  %v2230 = vadd.f32 %v1462, %v2108
  %v2231 = vadd.f32 %v1467, %v2113
  %v2232 = vadd.f32 %v1472, %v2118
  %v2233 = vadd.f32 %v1477, %v2123
  %v2234 = vadd.f32 %v1482, %v2128
  %v2235 = vadd.f32 %v1487, %v2133
  %v2236 = vadd.f32 %v1492, %v2138
  %v2237 = vadd.f32 %v1497, %v2143
  %v2238 = vadd.f32 %v1502, %v2148
  %v2239 = vadd.f32 %v1507, %v2153
  %v2240 = vadd.f32 %v1512, %v2158
  %v2241 = vadd.f32 %v1517, %v2163
  %v2242 = vadd.f32 %v1522, %v2168
  %v2243 = vadd.f32 %v1527, %v2173
  %v2244 = vadd.f32 %v1532, %v2178
  %v2245 = vld [vmem:[%s178] sm:$0xff]
  %v2246 = vld [vmem:[%s178 + $0x8] sm:$0xff]
  %v2247 = vld [vmem:[%s178 + $0x18] sm:$0xff]
  %v2248 = vld [vmem:[%s178 + $0x20] sm:$0xff]
  %v2249 = vld [vmem:[%s178 + $0x30] sm:$0xff]
  %v2250 = vld [vmem:[%s178 + $0x38] sm:$0xff]
  %v2251 = vld [vmem:[%s178 + $0x48] sm:$0xff]
  %v2252 = vld [vmem:[%s178 + $0x50] sm:$0xff]
  %v2253 = vld [vmem:[%s178 + $0x60] sm:$0xff]
  %v2254 = vld [vmem:[%s178 + $0x68] sm:$0xff]
  %v2255 = vld [vmem:[%s178 + $0x78] sm:$0xff]
  %v2256 = vld [vmem:[%s178 + $0x80] sm:$0xff]
  %v2257 = vld [vmem:[%s178 + $0x90] sm:$0xff]
  %v2258 = vld [vmem:[%s178 + $0x98] sm:$0xff]
  %v2259 = vld [vmem:[%s178 + $0xa8] sm:$0xff]
  %v2260 = vld [vmem:[%s178 + $0xb0] sm:$0xff]
  %v2261 = vld [vmem:[%s178 + $0xc0] sm:$0xff]
  %v2262 = vld [vmem:[%s178 + $0xc8] sm:$0xff]
  %v2263 = vld [vmem:[%s178 + $0xd8] sm:$0xff]
  %v2264 = vld [vmem:[%s178 + $0xe0] sm:$0xff]
  %v2265 = vld [vmem:[%s178 + $0xf0] sm:$0xff]
  %v2266 = vld [vmem:[%s178 + $0xf8] sm:$0xff]
  %v2267 = vld [vmem:[%s178 + $0x108] sm:$0xff]
  %v2268 = vld [vmem:[%s178 + $0x110] sm:$0xff]
  %v2269 = vld [vmem:[%s178 + $0x120] sm:$0xff]
  %v2270 = vld [vmem:[%s178 + $0x128] sm:$0xff]
  %v2271 = vld [vmem:[%s178 + $0x138] sm:$0xff]
  %v2272 = vld [vmem:[%s178 + $0x140] sm:$0xff]
  %v2273 = vld [vmem:[%s178 + $0x150] sm:$0xff]
  %v2274 = vld [vmem:[%s178 + $0x158] sm:$0xff]
  %v2275 = vld [vmem:[%s178 + $0x168] sm:$0xff]
  %v2276 = vld [vmem:[%s178 + $0x170] sm:$0xff]
  %v2277 = vld [vmem:[%s178 + $0x1b0] sm:$0xff]
  %v2278 = vld [vmem:[%s178 + $0x1b8] sm:$0xff]
  %v2279 = vld [vmem:[%s178 + $0x1c8] sm:$0xff]
  %v2280 = vld [vmem:[%s178 + $0x1d0] sm:$0xff]
  %v2281 = vld [vmem:[%s178 + $0x1e0] sm:$0xff]
  %v2282 = vld [vmem:[%s178 + $0x1e8] sm:$0xff]
  %v2283 = vld [vmem:[%s178 + $0x1f8] sm:$0xff]
  %v2284 = vld [vmem:[%s178 + $0x200] sm:$0xff]
  %v2285 = vld [vmem:[%s178 + $0x210] sm:$0xff]
  %v2286 = vld [vmem:[%s178 + $0x218] sm:$0xff]
  %v2287 = vld [vmem:[%s178 + $0x228] sm:$0xff]
  %v2288 = vld [vmem:[%s178 + $0x230] sm:$0xff]
  %v2289 = vld [vmem:[%s178 + $0x240] sm:$0xff]
  %v2290 = vld [vmem:[%s178 + $0x248] sm:$0xff]
  %v2291 = vld [vmem:[%s178 + $0x258] sm:$0xff]
  %v2292 = vld [vmem:[%s178 + $0x260] sm:$0xff]
  %v2293 = vld [vmem:[%s178 + $0x270] sm:$0xff]
  %v2294 = vld [vmem:[%s178 + $0x278] sm:$0xff]
  %v2295 = vld [vmem:[%s178 + $0x288] sm:$0xff]
  %v2296 = vld [vmem:[%s178 + $0x290] sm:$0xff]
  %v2297 = vld [vmem:[%s178 + $0x2a0] sm:$0xff]
  %v2298 = vld [vmem:[%s178 + $0x2a8] sm:$0xff]
  %v2299 = vld [vmem:[%s178 + $0x2b8] sm:$0xff]
  %v2300 = vld [vmem:[%s178 + $0x2c0] sm:$0xff]
  %v2301 = vld [vmem:[%s178 + $0x2d0] sm:$0xff]
  %v2302 = vld [vmem:[%s178 + $0x2d8] sm:$0xff]
  %v2303 = vld [vmem:[%s178 + $0x2e8] sm:$0xff]
  %v2304 = vld [vmem:[%s178 + $0x2f0] sm:$0xff]
  %v2305 = vld [vmem:[%s178 + $0x300] sm:$0xff]
  %v2306 = vld [vmem:[%s178 + $0x308] sm:$0xff]
  %v2307 = vld [vmem:[%s178 + $0x318] sm:$0xff]
  %v2308 = vld [vmem:[%s178 + $0x320] sm:$0xff]
  %s2309 = scalar_lea.vmem %s1, 12
  %v2310 = vld [vmem:[%s2309] sm:$0xf]
  %v2312 = vsel %vm26, %v2245, 0
  %v2315 = vsel %vm26, %v2246, 0
  %v2318 = vsel %vm26, %v2247, 0
  %v2321 = vsel %vm26, %v2248, 0
  %v2324 = vsel %vm26, %v2249, 0
  %v2327 = vsel %vm26, %v2250, 0
  %v2330 = vsel %vm26, %v2251, 0
  %v2333 = vsel %vm26, %v2252, 0
  %v2336 = vsel %vm26, %v2253, 0
  %v2339 = vsel %vm26, %v2254, 0
  %v2342 = vsel %vm26, %v2255, 0
  %v2345 = vsel %vm26, %v2256, 0
  %v2348 = vsel %vm26, %v2257, 0
  %v2351 = vsel %vm26, %v2258, 0
  %v2354 = vsel %vm26, %v2259, 0
  %v2357 = vsel %vm26, %v2260, 0
  %v2360 = vsel %vm26, %v2261, 0
  %v2363 = vsel %vm26, %v2262, 0
  %v2366 = vsel %vm26, %v2263, 0
  %v2369 = vsel %vm26, %v2264, 0
  %v2372 = vsel %vm26, %v2265, 0
  %v2375 = vsel %vm26, %v2266, 0
  %v2378 = vsel %vm26, %v2267, 0
  %v2381 = vsel %vm26, %v2268, 0
  %v2384 = vsel %vm26, %v2269, 0
  %v2387 = vsel %vm26, %v2270, 0
  %v2390 = vsel %vm26, %v2271, 0
  %v2393 = vsel %vm26, %v2272, 0
  %v2396 = vsel %vm26, %v2273, 0
  %v2399 = vsel %vm26, %v2274, 0
  %v2402 = vsel %vm26, %v2275, 0
  %v2405 = vsel %vm26, %v2276, 0
  %v2408 = vsel %vm26, %v2277, 0
  %v2411 = vsel %vm26, %v2278, 0
  %v2414 = vsel %vm26, %v2279, 0
  %v2417 = vsel %vm26, %v2280, 0
  %v2420 = vsel %vm26, %v2281, 0
  %v2423 = vsel %vm26, %v2282, 0
  %v2426 = vsel %vm26, %v2283, 0
  %v2429 = vsel %vm26, %v2284, 0
  %v2432 = vsel %vm26, %v2285, 0
  %v2435 = vsel %vm26, %v2286, 0
  %v2438 = vsel %vm26, %v2287, 0
  %v2441 = vsel %vm26, %v2288, 0
  %v2444 = vsel %vm26, %v2289, 0
  %v2447 = vsel %vm26, %v2290, 0
  %v2450 = vsel %vm26, %v2291, 0
  %v2453 = vsel %vm26, %v2292, 0
  %v2456 = vsel %vm26, %v2293, 0
  %v2459 = vsel %vm26, %v2294, 0
  %v2462 = vsel %vm26, %v2295, 0
  %v2465 = vsel %vm26, %v2296, 0
  %v2468 = vsel %vm26, %v2297, 0
  %v2471 = vsel %vm26, %v2298, 0
  %v2474 = vsel %vm26, %v2299, 0
  %v2477 = vsel %vm26, %v2300, 0
  %v2480 = vsel %vm26, %v2301, 0
  %v2483 = vsel %vm26, %v2302, 0
  %v2486 = vsel %vm26, %v2303, 0
  %v2489 = vsel %vm26, %v2304, 0
  %v2492 = vsel %vm26, %v2305, 0
  %v2495 = vsel %vm26, %v2306, 0
  %v2498 = vsel %vm26, %v2307, 0
  %v2501 = vsel %vm26, %v2308, 0
  %v2504 = vsel %vm566, %v2310, 0
  %2506 = vmatprep.subr.mxu0 0.0
  %2507 = vmatpush1.msra.mxu0 %v2504
  %2508 = vmatprep.subr.mxu0 0.0
  %2509 = vmatpush1.msra.mxu0 0.0
  %2510 = vmatprep.subr.mxu0 0.0
  %2511 = vmatpush1.msra.mxu0 0.0
  %2512 = vmatprep.subr.mxu0 0.0
  %2513 = vmatpush1.msra.mxu0 0.0
  %2514 = vmatprep.subr.mxu0 0.0
  %2515 = vmatpush1.msra.mxu0 0.0
  %2516 = vmatprep.subr.mxu0 0.0
  %2517 = vmatpush1.msra.mxu0 0.0
  %2518 = vmatprep.subr.mxu0 0.0
  %2519 = vmatpush1.msra.mxu0 0.0
  %2520 = vmatprep.subr.mxu0 0.0
  %2521 = vmatpush1.msra.mxu0 0.0
  %2522 = vmatprep.subr.mxu0 0.0
  %2523 = vmatpush1.msra.mxu0 0.0
  %2524 = vmatprep.subr.mxu0 0.0
  %2525 = vmatpush1.msra.mxu0 0.0
  %2526 = vmatprep.subr.mxu0 0.0
  %2527 = vmatpush1.msra.mxu0 0.0
  %2528 = vmatprep.subr.mxu0 0.0
  %2529 = vmatpush1.msra.mxu0 0.0
  %2530 = vmatprep.subr.mxu0 0.0
  %2531 = vmatpush1.msra.mxu0 0.0
  %2532 = vmatprep.subr.mxu0 0.0
  %2533 = vmatpush1.msra.mxu0 0.0
  %2534 = vmatprep.subr.mxu0 0.0
  %2535 = vmatpush1.msra.mxu0 0.0
  %2536 = vmatprep.subr.mxu0 0.0
  %2537 = vmatpush1.msra.mxu0 0.0
  %2538 = vmatprep.subr.mxu0 0.0
  %2539 = vmatpush1.msra.mxu0 0.0
  %2540 = vmatprep.subr.mxu0 0.0
  %2541 = vmatpush1.msra.mxu0 0.0
  %2542 = vmatprep.subr.mxu0 0.0
  %2543 = vmatpush1.msra.mxu0 0.0
  %2544 = vmatprep.subr.mxu0 0.0
  %2545 = vmatpush1.msra.mxu0 0.0
  %2546 = vmatprep.subr.mxu0 0.0
  %2547 = vmatpush1.msra.mxu0 0.0
  %2548 = vmatprep.subr.mxu0 0.0
  %2549 = vmatpush1.msra.mxu0 0.0
  %2550 = vmatprep.subr.mxu0 0.0
  %2551 = vmatpush1.msra.mxu0 0.0
  %2552 = vmatprep.subr.mxu0 0.0
  %2553 = vmatpush1.msra.mxu0 0.0
  %2554 = vmatprep.subr.mxu0 0.0
  %2555 = vmatpush1.msra.mxu0 0.0
  %2556 = vmatprep.subr.mxu0 0.0
  %2557 = vmatpush1.msra.mxu0 0.0
  %2558 = vmatprep.subr.mxu0 0.0
  %2559 = vmatpush1.msra.mxu0 0.0
  %2560 = vmatprep.subr.mxu0 0.0
  %2561 = vmatpush1.msra.mxu0 0.0
  %2562 = vmatprep.subr.mxu0 0.0
  %2563 = vmatpush1.msra.mxu0 0.0
  %2564 = vmatprep.subr.mxu0 0.0
  %2565 = vmatpush1.msra.mxu0 0.0
  %2566 = vmatprep.subr.mxu0 0.0
  %2567 = vmatpush1.msra.mxu0 0.0
  %2568 = vmatprep.subr.mxu0 0.0
  %2569 = vmatpush1.msra.mxu0 0.0
  %2570 = vmatprep.mubr.f32.mxu0 0.0
  %2571 = vmatmul.mubr.f32.gmra.mrb[0].mxu0 %v2312
  %v2572 = vpop.f32.mrb[0].mxu0
  %v2573 = vadd.f32 0.0, %v2572
  %v2574 = vpop.f32.mrb[0].mxu0
  %2575 = vmatprep.mubr.f32.mxu0 0.0
  %2576 = vmatmul.mubr.f32.gmra.mrb[0].mxu0 %v2315
  %v2577 = vpop.f32.mrb[0].mxu0
  %v2578 = vadd.f32 0.0, %v2577
  %v2579 = vpop.f32.mrb[0].mxu0
  %2580 = vmatprep.mubr.f32.mxu0 0.0
  %2581 = vmatmul.mubr.f32.gmra.mrb[0].mxu0 %v2318
  %v2582 = vpop.f32.mrb[0].mxu0
  %v2583 = vadd.f32 0.0, %v2582
  %v2584 = vpop.f32.mrb[0].mxu0
  %2585 = vmatprep.mubr.f32.mxu0 0.0
  %2586 = vmatmul.mubr.f32.gmra.mrb[0].mxu0 %v2321
  %v2587 = vpop.f32.mrb[0].mxu0
  %v2588 = vadd.f32 0.0, %v2587
  %v2589 = vpop.f32.mrb[0].mxu0
  %2590 = vmatprep.mubr.f32.mxu0 0.0
  %2591 = vmatmul.mubr.f32.gmra.mrb[0].mxu0 %v2324
  %v2592 = vpop.f32.mrb[0].mxu0
  %v2593 = vadd.f32 0.0, %v2592
  %v2594 = vpop.f32.mrb[0].mxu0
  %2595 = vmatprep.mubr.f32.mxu0 0.0
  %2596 = vmatmul.mubr.f32.gmra.mrb[0].mxu0 %v2327
  %v2597 = vpop.f32.mrb[0].mxu0
  %v2598 = vadd.f32 0.0, %v2597
  %v2599 = vpop.f32.mrb[0].mxu0
  %2600 = vmatprep.mubr.f32.mxu0 0.0
  %2601 = vmatmul.mubr.f32.gmra.mrb[0].mxu0 %v2330
  %v2602 = vpop.f32.mrb[0].mxu0
  %v2603 = vadd.f32 0.0, %v2602
  %v2604 = vpop.f32.mrb[0].mxu0
  %2605 = vmatprep.mubr.f32.mxu0 0.0
  %2606 = vmatmul.mubr.f32.gmra.mrb[0].mxu0 %v2333
  %v2607 = vpop.f32.mrb[0].mxu0
  %v2608 = vadd.f32 0.0, %v2607
  %v2609 = vpop.f32.mrb[0].mxu0
  %2610 = vmatprep.mubr.f32.mxu0 0.0
  %2611 = vmatmul.mubr.f32.gmra.mrb[0].mxu0 %v2336
  %v2612 = vpop.f32.mrb[0].mxu0
  %v2613 = vadd.f32 0.0, %v2612
  %v2614 = vpop.f32.mrb[0].mxu0
  %2615 = vmatprep.mubr.f32.mxu0 0.0
  %2616 = vmatmul.mubr.f32.gmra.mrb[0].mxu0 %v2339
  %v2617 = vpop.f32.mrb[0].mxu0
  %v2618 = vadd.f32 0.0, %v2617
  %v2619 = vpop.f32.mrb[0].mxu0
  %2620 = vmatprep.mubr.f32.mxu0 0.0
  %2621 = vmatmul.mubr.f32.gmra.mrb[0].mxu0 %v2342
  %v2622 = vpop.f32.mrb[0].mxu0
  %v2623 = vadd.f32 0.0, %v2622
  %v2624 = vpop.f32.mrb[0].mxu0
  %2625 = vmatprep.mubr.f32.mxu0 0.0
  %2626 = vmatmul.mubr.f32.gmra.mrb[0].mxu0 %v2345
  %v2627 = vpop.f32.mrb[0].mxu0
  %v2628 = vadd.f32 0.0, %v2627
  %v2629 = vpop.f32.mrb[0].mxu0
  %2630 = vmatprep.mubr.f32.mxu0 0.0
  %2631 = vmatmul.mubr.f32.gmra.mrb[0].mxu0 %v2348
  %v2632 = vpop.f32.mrb[0].mxu0
  %v2633 = vadd.f32 0.0, %v2632
  %v2634 = vpop.f32.mrb[0].mxu0
  %2635 = vmatprep.mubr.f32.mxu0 0.0
  %2636 = vmatmul.mubr.f32.gmra.mrb[0].mxu0 %v2351
  %v2637 = vpop.f32.mrb[0].mxu0
  %v2638 = vadd.f32 0.0, %v2637
  %v2639 = vpop.f32.mrb[0].mxu0
  %2640 = vmatprep.mubr.f32.mxu0 0.0
  %2641 = vmatmul.mubr.f32.gmra.mrb[0].mxu0 %v2354
  %v2642 = vpop.f32.mrb[0].mxu0
  %v2643 = vadd.f32 0.0, %v2642
  %v2644 = vpop.f32.mrb[0].mxu0
  %2645 = vmatprep.mubr.f32.mxu0 0.0
  %2646 = vmatmul.mubr.f32.gmra.mrb[0].mxu0 %v2357
  %v2647 = vpop.f32.mrb[0].mxu0
  %v2648 = vadd.f32 0.0, %v2647
  %v2649 = vpop.f32.mrb[0].mxu0
  %2650 = vmatprep.mubr.f32.mxu0 0.0
  %2651 = vmatmul.mubr.f32.gmra.mrb[0].mxu0 %v2360
  %v2652 = vpop.f32.mrb[0].mxu0
  %v2653 = vadd.f32 0.0, %v2652
  %v2654 = vpop.f32.mrb[0].mxu0
  %2655 = vmatprep.mubr.f32.mxu0 0.0
  %2656 = vmatmul.mubr.f32.gmra.mrb[0].mxu0 %v2363
  %v2657 = vpop.f32.mrb[0].mxu0
  %v2658 = vadd.f32 0.0, %v2657
  %v2659 = vpop.f32.mrb[0].mxu0
  %2660 = vmatprep.mubr.f32.mxu0 0.0
  %2661 = vmatmul.mubr.f32.gmra.mrb[0].mxu0 %v2366
  %v2662 = vpop.f32.mrb[0].mxu0
  %v2663 = vadd.f32 0.0, %v2662
  %v2664 = vpop.f32.mrb[0].mxu0
  %2665 = vmatprep.mubr.f32.mxu0 0.0
  %2666 = vmatmul.mubr.f32.gmra.mrb[0].mxu0 %v2369
  %v2667 = vpop.f32.mrb[0].mxu0
  %v2668 = vadd.f32 0.0, %v2667
  %v2669 = vpop.f32.mrb[0].mxu0
  %2670 = vmatprep.mubr.f32.mxu0 0.0
  %2671 = vmatmul.mubr.f32.gmra.mrb[0].mxu0 %v2372
  %v2672 = vpop.f32.mrb[0].mxu0
  %v2673 = vadd.f32 0.0, %v2672
  %v2674 = vpop.f32.mrb[0].mxu0
  %2675 = vmatprep.mubr.f32.mxu0 0.0
  %2676 = vmatmul.mubr.f32.gmra.mrb[0].mxu0 %v2375
  %v2677 = vpop.f32.mrb[0].mxu0
  %v2678 = vadd.f32 0.0, %v2677
  %v2679 = vpop.f32.mrb[0].mxu0
  %2680 = vmatprep.mubr.f32.mxu0 0.0
  %2681 = vmatmul.mubr.f32.gmra.mrb[0].mxu0 %v2378
  %v2682 = vpop.f32.mrb[0].mxu0
  %v2683 = vadd.f32 0.0, %v2682
  %v2684 = vpop.f32.mrb[0].mxu0
  %2685 = vmatprep.mubr.f32.mxu0 0.0
  %2686 = vmatmul.mubr.f32.gmra.mrb[0].mxu0 %v2381
  %v2687 = vpop.f32.mrb[0].mxu0
  %v2688 = vadd.f32 0.0, %v2687
  %v2689 = vpop.f32.mrb[0].mxu0
  %2690 = vmatprep.mubr.f32.mxu0 0.0
  %2691 = vmatmul.mubr.f32.gmra.mrb[0].mxu0 %v2384
  %v2692 = vpop.f32.mrb[0].mxu0
  %v2693 = vadd.f32 0.0, %v2692
  %v2694 = vpop.f32.mrb[0].mxu0
  %2695 = vmatprep.mubr.f32.mxu0 0.0
  %2696 = vmatmul.mubr.f32.gmra.mrb[0].mxu0 %v2387
  %v2697 = vpop.f32.mrb[0].mxu0
  %v2698 = vadd.f32 0.0, %v2697
  %v2699 = vpop.f32.mrb[0].mxu0
  %2700 = vmatprep.mubr.f32.mxu0 0.0
  %2701 = vmatmul.mubr.f32.gmra.mrb[0].mxu0 %v2390
  %v2702 = vpop.f32.mrb[0].mxu0
  %v2703 = vadd.f32 0.0, %v2702
  %v2704 = vpop.f32.mrb[0].mxu0
  %2705 = vmatprep.mubr.f32.mxu0 0.0
  %2706 = vmatmul.mubr.f32.gmra.mrb[0].mxu0 %v2393
  %v2707 = vpop.f32.mrb[0].mxu0
  %v2708 = vadd.f32 0.0, %v2707
  %v2709 = vpop.f32.mrb[0].mxu0
  %2710 = vmatprep.mubr.f32.mxu0 0.0
  %2711 = vmatmul.mubr.f32.gmra.mrb[0].mxu0 %v2396
  %v2712 = vpop.f32.mrb[0].mxu0
  %v2713 = vadd.f32 0.0, %v2712
  %v2714 = vpop.f32.mrb[0].mxu0
  %2715 = vmatprep.mubr.f32.mxu0 0.0
  %2716 = vmatmul.mubr.f32.gmra.mrb[0].mxu0 %v2399
  %v2717 = vpop.f32.mrb[0].mxu0
  %v2718 = vadd.f32 0.0, %v2717
  %v2719 = vpop.f32.mrb[0].mxu0
  %2720 = vmatprep.mubr.f32.mxu0 0.0
  %2721 = vmatmul.mubr.f32.gmra.mrb[0].mxu0 %v2402
  %v2722 = vpop.f32.mrb[0].mxu0
  %v2723 = vadd.f32 0.0, %v2722
  %v2724 = vpop.f32.mrb[0].mxu0
  %2725 = vmatprep.mubr.f32.mxu0 0.0
  %2726 = vmatmul.mubr.f32.gmra.mrb[0].mxu0 %v2405
  %v2727 = vpop.f32.mrb[0].mxu0
  %v2728 = vadd.f32 0.0, %v2727
  %v2729 = vpop.f32.mrb[0].mxu0
  %2730 = vmatprep.mubr.f32.mxu0 0.0
  %2731 = vmatmul.mubr.f32.gmra.mrb[0].mxu0 %v2408
  %v2732 = vpop.f32.mrb[0].mxu0
  %v2733 = vadd.f32 0.0, %v2732
  %v2734 = vpop.f32.mrb[0].mxu0
  %2735 = vmatprep.mubr.f32.mxu0 0.0
  %2736 = vmatmul.mubr.f32.gmra.mrb[0].mxu0 %v2411
  %v2737 = vpop.f32.mrb[0].mxu0
  %v2738 = vadd.f32 0.0, %v2737
  %v2739 = vpop.f32.mrb[0].mxu0
  %2740 = vmatprep.mubr.f32.mxu0 0.0
  %2741 = vmatmul.mubr.f32.gmra.mrb[0].mxu0 %v2414
  %v2742 = vpop.f32.mrb[0].mxu0
  %v2743 = vadd.f32 0.0, %v2742
  %v2744 = vpop.f32.mrb[0].mxu0
  %2745 = vmatprep.mubr.f32.mxu0 0.0
  %2746 = vmatmul.mubr.f32.gmra.mrb[0].mxu0 %v2417
  %v2747 = vpop.f32.mrb[0].mxu0
  %v2748 = vadd.f32 0.0, %v2747
  %v2749 = vpop.f32.mrb[0].mxu0
  %2750 = vmatprep.mubr.f32.mxu0 0.0
  %2751 = vmatmul.mubr.f32.gmra.mrb[0].mxu0 %v2420
  %v2752 = vpop.f32.mrb[0].mxu0
  %v2753 = vadd.f32 0.0, %v2752
  %v2754 = vpop.f32.mrb[0].mxu0
  %2755 = vmatprep.mubr.f32.mxu0 0.0
  %2756 = vmatmul.mubr.f32.gmra.mrb[0].mxu0 %v2423
  %v2757 = vpop.f32.mrb[0].mxu0
  %v2758 = vadd.f32 0.0, %v2757
  %v2759 = vpop.f32.mrb[0].mxu0
  %2760 = vmatprep.mubr.f32.mxu0 0.0
  %2761 = vmatmul.mubr.f32.gmra.mrb[0].mxu0 %v2426
  %v2762 = vpop.f32.mrb[0].mxu0
  %v2763 = vadd.f32 0.0, %v2762
  %v2764 = vpop.f32.mrb[0].mxu0
  %2765 = vmatprep.mubr.f32.mxu0 0.0
  %2766 = vmatmul.mubr.f32.gmra.mrb[0].mxu0 %v2429
  %v2767 = vpop.f32.mrb[0].mxu0
  %v2768 = vadd.f32 0.0, %v2767
  %v2769 = vpop.f32.mrb[0].mxu0
  %2770 = vmatprep.mubr.f32.mxu0 0.0
  %2771 = vmatmul.mubr.f32.gmra.mrb[0].mxu0 %v2432
  %v2772 = vpop.f32.mrb[0].mxu0
  %v2773 = vadd.f32 0.0, %v2772
  %v2774 = vpop.f32.mrb[0].mxu0
  %2775 = vmatprep.mubr.f32.mxu0 0.0
  %2776 = vmatmul.mubr.f32.gmra.mrb[0].mxu0 %v2435
  %v2777 = vpop.f32.mrb[0].mxu0
  %v2778 = vadd.f32 0.0, %v2777
  %v2779 = vpop.f32.mrb[0].mxu0
  %2780 = vmatprep.mubr.f32.mxu0 0.0
  %2781 = vmatmul.mubr.f32.gmra.mrb[0].mxu0 %v2438
  %v2782 = vpop.f32.mrb[0].mxu0
  %v2783 = vadd.f32 0.0, %v2782
  %v2784 = vpop.f32.mrb[0].mxu0
  %2785 = vmatprep.mubr.f32.mxu0 0.0
  %2786 = vmatmul.mubr.f32.gmra.mrb[0].mxu0 %v2441
  %v2787 = vpop.f32.mrb[0].mxu0
  %v2788 = vadd.f32 0.0, %v2787
  %v2789 = vpop.f32.mrb[0].mxu0
  %2790 = vmatprep.mubr.f32.mxu0 0.0
  %2791 = vmatmul.mubr.f32.gmra.mrb[0].mxu0 %v2444
  %v2792 = vpop.f32.mrb[0].mxu0
  %v2793 = vadd.f32 0.0, %v2792
  %v2794 = vpop.f32.mrb[0].mxu0
  %2795 = vmatprep.mubr.f32.mxu0 0.0
  %2796 = vmatmul.mubr.f32.gmra.mrb[0].mxu0 %v2447
  %v2797 = vpop.f32.mrb[0].mxu0
  %v2798 = vadd.f32 0.0, %v2797
  %v2799 = vpop.f32.mrb[0].mxu0
  %2800 = vmatprep.mubr.f32.mxu0 0.0
  %2801 = vmatmul.mubr.f32.gmra.mrb[0].mxu0 %v2450
  %v2802 = vpop.f32.mrb[0].mxu0
  %v2803 = vadd.f32 0.0, %v2802
  %v2804 = vpop.f32.mrb[0].mxu0
  %2805 = vmatprep.mubr.f32.mxu0 0.0
  %2806 = vmatmul.mubr.f32.gmra.mrb[0].mxu0 %v2453
  %v2807 = vpop.f32.mrb[0].mxu0
  %v2808 = vadd.f32 0.0, %v2807
  %v2809 = vpop.f32.mrb[0].mxu0
  %2810 = vmatprep.mubr.f32.mxu0 0.0
  %2811 = vmatmul.mubr.f32.gmra.mrb[0].mxu0 %v2456
  %v2812 = vpop.f32.mrb[0].mxu0
  %v2813 = vadd.f32 0.0, %v2812
  %v2814 = vpop.f32.mrb[0].mxu0
  %2815 = vmatprep.mubr.f32.mxu0 0.0
  %2816 = vmatmul.mubr.f32.gmra.mrb[0].mxu0 %v2459
  %v2817 = vpop.f32.mrb[0].mxu0
  %v2818 = vadd.f32 0.0, %v2817
  %v2819 = vpop.f32.mrb[0].mxu0
  %2820 = vmatprep.mubr.f32.mxu0 0.0
  %2821 = vmatmul.mubr.f32.gmra.mrb[0].mxu0 %v2462
  %v2822 = vpop.f32.mrb[0].mxu0
  %v2823 = vadd.f32 0.0, %v2822
  %v2824 = vpop.f32.mrb[0].mxu0
  %2825 = vmatprep.mubr.f32.mxu0 0.0
  %2826 = vmatmul.mubr.f32.gmra.mrb[0].mxu0 %v2465
  %v2827 = vpop.f32.mrb[0].mxu0
  %v2828 = vadd.f32 0.0, %v2827
  %v2829 = vpop.f32.mrb[0].mxu0
  %2830 = vmatprep.mubr.f32.mxu0 0.0
  %2831 = vmatmul.mubr.f32.gmra.mrb[0].mxu0 %v2468
  %v2832 = vpop.f32.mrb[0].mxu0
  %v2833 = vadd.f32 0.0, %v2832
  %v2834 = vpop.f32.mrb[0].mxu0
  %2835 = vmatprep.mubr.f32.mxu0 0.0
  %2836 = vmatmul.mubr.f32.gmra.mrb[0].mxu0 %v2471
  %v2837 = vpop.f32.mrb[0].mxu0
  %v2838 = vadd.f32 0.0, %v2837
  %v2839 = vpop.f32.mrb[0].mxu0
  %2840 = vmatprep.mubr.f32.mxu0 0.0
  %2841 = vmatmul.mubr.f32.gmra.mrb[0].mxu0 %v2474
  %v2842 = vpop.f32.mrb[0].mxu0
  %v2843 = vadd.f32 0.0, %v2842
  %v2844 = vpop.f32.mrb[0].mxu0
  %2845 = vmatprep.mubr.f32.mxu0 0.0
  %2846 = vmatmul.mubr.f32.gmra.mrb[0].mxu0 %v2477
  %v2847 = vpop.f32.mrb[0].mxu0
  %v2848 = vadd.f32 0.0, %v2847
  %v2849 = vpop.f32.mrb[0].mxu0
  %2850 = vmatprep.mubr.f32.mxu0 0.0
  %2851 = vmatmul.mubr.f32.gmra.mrb[0].mxu0 %v2480
  %v2852 = vpop.f32.mrb[0].mxu0
  %v2853 = vadd.f32 0.0, %v2852
  %v2854 = vpop.f32.mrb[0].mxu0
  %2855 = vmatprep.mubr.f32.mxu0 0.0
  %2856 = vmatmul.mubr.f32.gmra.mrb[0].mxu0 %v2483
  %v2857 = vpop.f32.mrb[0].mxu0
  %v2858 = vadd.f32 0.0, %v2857
  %v2859 = vpop.f32.mrb[0].mxu0
  %2860 = vmatprep.mubr.f32.mxu0 0.0
  %2861 = vmatmul.mubr.f32.gmra.mrb[0].mxu0 %v2486
  %v2862 = vpop.f32.mrb[0].mxu0
  %v2863 = vadd.f32 0.0, %v2862
  %v2864 = vpop.f32.mrb[0].mxu0
  %2865 = vmatprep.mubr.f32.mxu0 0.0
  %2866 = vmatmul.mubr.f32.gmra.mrb[0].mxu0 %v2489
  %v2867 = vpop.f32.mrb[0].mxu0
  %v2868 = vadd.f32 0.0, %v2867
  %v2869 = vpop.f32.mrb[0].mxu0
  %2870 = vmatprep.mubr.f32.mxu0 0.0
  %2871 = vmatmul.mubr.f32.gmra.mrb[0].mxu0 %v2492
  %v2872 = vpop.f32.mrb[0].mxu0
  %v2873 = vadd.f32 0.0, %v2872
  %v2874 = vpop.f32.mrb[0].mxu0
  %2875 = vmatprep.mubr.f32.mxu0 0.0
  %2876 = vmatmul.mubr.f32.gmra.mrb[0].mxu0 %v2495
  %v2877 = vpop.f32.mrb[0].mxu0
  %v2878 = vadd.f32 0.0, %v2877
  %v2879 = vpop.f32.mrb[0].mxu0
  %2880 = vmatprep.mubr.f32.mxu0 0.0
  %2881 = vmatmul.mubr.f32.gmra.mrb[0].mxu0 %v2498
  %v2882 = vpop.f32.mrb[0].mxu0
  %v2883 = vadd.f32 0.0, %v2882
  %v2884 = vpop.f32.mrb[0].mxu0
  %2885 = vmatprep.mubr.f32.mxu0 0.0
  %2886 = vmatmul.mubr.f32.gmra.mrb[0].mxu0 %v2501
  %v2887 = vpop.f32.mrb[0].mxu0
  %v2888 = vadd.f32 0.0, %v2887
  %v2889 = vpop.f32.mrb[0].mxu0
  %2890 = vdwg.mxu0
  %v2891 = vadd.f32 %v2181, %v2573
  %v2892 = vadd.f32 %v2182, %v2578
  %v2893 = vadd.f32 %v2183, %v2583
  %v2894 = vadd.f32 %v2184, %v2588
  %v2895 = vadd.f32 %v2185, %v2593
  %v2896 = vadd.f32 %v2186, %v2598
  %v2897 = vadd.f32 %v2187, %v2603
  %v2898 = vadd.f32 %v2188, %v2608
  %v2899 = vadd.f32 %v2189, %v2613
  %v2900 = vadd.f32 %v2190, %v2618
  %v2901 = vadd.f32 %v2191, %v2623
  %v2902 = vadd.f32 %v2192, %v2628
  %v2903 = vadd.f32 %v2193, %v2633
  %v2904 = vadd.f32 %v2194, %v2638
  %v2905 = vadd.f32 %v2195, %v2643
  %v2906 = vadd.f32 %v2196, %v2648
  %v2907 = vadd.f32 %v2197, %v2653
  %v2908 = vadd.f32 %v2198, %v2658
  %v2909 = vadd.f32 %v2199, %v2663
  %v2910 = vadd.f32 %v2200, %v2668
  %v2911 = vadd.f32 %v2201, %v2673
  %v2912 = vadd.f32 %v2202, %v2678
  %v2913 = vadd.f32 %v2203, %v2683
  %v2914 = vadd.f32 %v2204, %v2688
  %v2915 = vadd.f32 %v2205, %v2693
  %v2916 = vadd.f32 %v2206, %v2698
  %v2917 = vadd.f32 %v2207, %v2703
  %v2918 = vadd.f32 %v2208, %v2708
  %v2919 = vadd.f32 %v2209, %v2713
  %v2920 = vadd.f32 %v2210, %v2718
  %v2921 = vadd.f32 %v2211, %v2723
  %v2922 = vadd.f32 %v2212, %v2728
  %v2923 = vadd.f32 %v2213, %v2733
  %v2924 = vadd.f32 %v2214, %v2738
  %v2925 = vadd.f32 %v2215, %v2743
  %v2926 = vadd.f32 %v2216, %v2748
  %v2927 = vadd.f32 %v2217, %v2753
  %v2928 = vadd.f32 %v2218, %v2758
  %v2929 = vadd.f32 %v2219, %v2763
  %v2930 = vadd.f32 %v2220, %v2768
  %v2931 = vadd.f32 %v2221, %v2773
  %v2932 = vadd.f32 %v2222, %v2778
  %v2933 = vadd.f32 %v2223, %v2783
  %v2934 = vadd.f32 %v2224, %v2788
  %v2935 = vadd.f32 %v2225, %v2793
  %v2936 = vadd.f32 %v2226, %v2798
  %v2937 = vadd.f32 %v2227, %v2803
  %v2938 = vadd.f32 %v2228, %v2808
  %v2939 = vadd.f32 %v2229, %v2813
  %v2940 = vadd.f32 %v2230, %v2818
  %v2941 = vadd.f32 %v2231, %v2823
  %v2942 = vadd.f32 %v2232, %v2828
  %v2943 = vadd.f32 %v2233, %v2833
  %v2944 = vadd.f32 %v2234, %v2838
  %v2945 = vadd.f32 %v2235, %v2843
  %v2946 = vadd.f32 %v2236, %v2848
  %v2947 = vadd.f32 %v2237, %v2853
  %v2948 = vadd.f32 %v2238, %v2858
  %v2949 = vadd.f32 %v2239, %v2863
  %v2950 = vadd.f32 %v2240, %v2868
  %v2951 = vadd.f32 %v2241, %v2873
  %v2952 = vadd.f32 %v2242, %v2878
  %v2953 = vadd.f32 %v2243, %v2883
  %v2954 = vadd.f32 %v2244, %v2888
  %v2955 = vld [vmem:[%s178 + $0x1] sm:$0xff]
  %v2956 = vld [vmem:[%s178 + $0x9] sm:$0xff]
  %v2957 = vld [vmem:[%s178 + $0x19] sm:$0xff]
  %v2958 = vld [vmem:[%s178 + $0x21] sm:$0xff]
  %v2959 = vld [vmem:[%s178 + $0x31] sm:$0xff]
  %v2960 = vld [vmem:[%s178 + $0x39] sm:$0xff]
  %v2961 = vld [vmem:[%s178 + $0x49] sm:$0xff]
  %v2962 = vld [vmem:[%s178 + $0x51] sm:$0xff]
  %v2963 = vld [vmem:[%s178 + $0x61] sm:$0xff]
  %v2964 = vld [vmem:[%s178 + $0x69] sm:$0xff]
  %v2965 = vld [vmem:[%s178 + $0x79] sm:$0xff]
  %v2966 = vld [vmem:[%s178 + $0x81] sm:$0xff]
  %v2967 = vld [vmem:[%s178 + $0x91] sm:$0xff]
  %v2968 = vld [vmem:[%s178 + $0x99] sm:$0xff]
  %v2969 = vld [vmem:[%s178 + $0xa9] sm:$0xff]
  %v2970 = vld [vmem:[%s178 + $0xb1] sm:$0xff]
  %v2971 = vld [vmem:[%s178 + $0xc1] sm:$0xff]
  %v2972 = vld [vmem:[%s178 + $0xc9] sm:$0xff]
  %v2973 = vld [vmem:[%s178 + $0xd9] sm:$0xff]
  %v2974 = vld [vmem:[%s178 + $0xe1] sm:$0xff]
  %v2975 = vld [vmem:[%s178 + $0xf1] sm:$0xff]
  %v2976 = vld [vmem:[%s178 + $0xf9] sm:$0xff]
  %v2977 = vld [vmem:[%s178 + $0x109] sm:$0xff]
  %v2978 = vld [vmem:[%s178 + $0x111] sm:$0xff]
  %v2979 = vld [vmem:[%s178 + $0x121] sm:$0xff]
  %v2980 = vld [vmem:[%s178 + $0x129] sm:$0xff]
  %v2981 = vld [vmem:[%s178 + $0x139] sm:$0xff]
  %v2982 = vld [vmem:[%s178 + $0x141] sm:$0xff]
  %v2983 = vld [vmem:[%s178 + $0x151] sm:$0xff]
  %v2984 = vld [vmem:[%s178 + $0x159] sm:$0xff]
  %v2985 = vld [vmem:[%s178 + $0x169] sm:$0xff]
  %v2986 = vld [vmem:[%s178 + $0x171] sm:$0xff]
  %v2987 = vld [vmem:[%s178 + $0x1b1] sm:$0xff]
  %v2988 = vld [vmem:[%s178 + $0x1b9] sm:$0xff]
  %v2989 = vld [vmem:[%s178 + $0x1c9] sm:$0xff]
  %v2990 = vld [vmem:[%s178 + $0x1d1] sm:$0xff]
  %v2991 = vld [vmem:[%s178 + $0x1e1] sm:$0xff]
  %v2992 = vld [vmem:[%s178 + $0x1e9] sm:$0xff]
  %v2993 = vld [vmem:[%s178 + $0x1f9] sm:$0xff]
  %v2994 = vld [vmem:[%s178 + $0x201] sm:$0xff]
  %v2995 = vld [vmem:[%s178 + $0x211] sm:$0xff]
  %v2996 = vld [vmem:[%s178 + $0x219] sm:$0xff]
  %v2997 = vld [vmem:[%s178 + $0x229] sm:$0xff]
  %v2998 = vld [vmem:[%s178 + $0x231] sm:$0xff]
  %v2999 = vld [vmem:[%s178 + $0x241] sm:$0xff]
  %v3000 = vld [vmem:[%s178 + $0x249] sm:$0xff]
  %v3001 = vld [vmem:[%s178 + $0x259] sm:$0xff]
  %v3002 = vld [vmem:[%s178 + $0x261] sm:$0xff]
  %v3003 = vld [vmem:[%s178 + $0x271] sm:$0xff]
  %v3004 = vld [vmem:[%s178 + $0x279] sm:$0xff]
  %v3005 = vld [vmem:[%s178 + $0x289] sm:$0xff]
  %v3006 = vld [vmem:[%s178 + $0x291] sm:$0xff]
  %v3007 = vld [vmem:[%s178 + $0x2a1] sm:$0xff]
  %v3008 = vld [vmem:[%s178 + $0x2a9] sm:$0xff]
  %v3009 = vld [vmem:[%s178 + $0x2b9] sm:$0xff]
  %v3010 = vld [vmem:[%s178 + $0x2c1] sm:$0xff]
  %v3011 = vld [vmem:[%s178 + $0x2d1] sm:$0xff]
  %v3012 = vld [vmem:[%s178 + $0x2d9] sm:$0xff]
  %v3013 = vld [vmem:[%s178 + $0x2e9] sm:$0xff]
  %v3014 = vld [vmem:[%s178 + $0x2f1] sm:$0xff]
  %v3015 = vld [vmem:[%s178 + $0x301] sm:$0xff]
  %v3016 = vld [vmem:[%s178 + $0x309] sm:$0xff]
  %v3017 = vld [vmem:[%s178 + $0x319] sm:$0xff]
  %v3018 = vld [vmem:[%s178 + $0x321] sm:$0xff]
  %s3019 = scalar_lea.vmem %s1, 16
  %v3020 = vld [vmem:[%s3019] sm:$0xf]
  %v3022 = vsel %vm26, %v2955, 0
  %v3025 = vsel %vm26, %v2956, 0
  %v3028 = vsel %vm26, %v2957, 0
  %v3031 = vsel %vm26, %v2958, 0
  %v3034 = vsel %vm26, %v2959, 0
  %v3037 = vsel %vm26, %v2960, 0
  %v3040 = vsel %vm26, %v2961, 0
  %v3043 = vsel %vm26, %v2962, 0
  %v3046 = vsel %vm26, %v2963, 0
  %v3049 = vsel %vm26, %v2964, 0
  %v3052 = vsel %vm26, %v2965, 0
  %v3055 = vsel %vm26, %v2966, 0
  %v3058 = vsel %vm26, %v2967, 0
  %v3061 = vsel %vm26, %v2968, 0
  %v3064 = vsel %vm26, %v2969, 0
  %v3067 = vsel %vm26, %v2970, 0
  %v3070 = vsel %vm26, %v2971, 0
  %v3073 = vsel %vm26, %v2972, 0
  %v3076 = vsel %vm26, %v2973, 0
  %v3079 = vsel %vm26, %v2974, 0
  %v3082 = vsel %vm26, %v2975, 0
  %v3085 = vsel %vm26, %v2976, 0
  %v3088 = vsel %vm26, %v2977, 0
  %v3091 = vsel %vm26, %v2978, 0
  %v3094 = vsel %vm26, %v2979, 0
  %v3097 = vsel %vm26, %v2980, 0
  %v3100 = vsel %vm26, %v2981, 0
  %v3103 = vsel %vm26, %v2982, 0
  %v3106 = vsel %vm26, %v2983, 0
  %v3109 = vsel %vm26, %v2984, 0
  %v3112 = vsel %vm26, %v2985, 0
  %v3115 = vsel %vm26, %v2986, 0
  %v3118 = vsel %vm26, %v2987, 0
  %v3121 = vsel %vm26, %v2988, 0
  %v3124 = vsel %vm26, %v2989, 0
  %v3127 = vsel %vm26, %v2990, 0
  %v3130 = vsel %vm26, %v2991, 0
  %v3133 = vsel %vm26, %v2992, 0
  %v3136 = vsel %vm26, %v2993, 0
  %v3139 = vsel %vm26, %v2994, 0
  %v3142 = vsel %vm26, %v2995, 0
  %v3145 = vsel %vm26, %v2996, 0
  %v3148 = vsel %vm26, %v2997, 0
  %v3151 = vsel %vm26, %v2998, 0
  %v3154 = vsel %vm26, %v2999, 0
  %v3157 = vsel %vm26, %v3000, 0
  %v3160 = vsel %vm26, %v3001, 0
  %v3163 = vsel %vm26, %v3002, 0
  %v3166 = vsel %vm26, %v3003, 0
  %v3169 = vsel %vm26, %v3004, 0
  %v3172 = vsel %vm26, %v3005, 0
  %v3175 = vsel %vm26, %v3006, 0
  %v3178 = vsel %vm26, %v3007, 0
  %v3181 = vsel %vm26, %v3008, 0
  %v3184 = vsel %vm26, %v3009, 0
  %v3187 = vsel %vm26, %v3010, 0
  %v3190 = vsel %vm26, %v3011, 0
  %v3193 = vsel %vm26, %v3012, 0
  %v3196 = vsel %vm26, %v3013, 0
  %v3199 = vsel %vm26, %v3014, 0
  %v3202 = vsel %vm26, %v3015, 0
  %v3205 = vsel %vm26, %v3016, 0
  %v3208 = vsel %vm26, %v3017, 0
  %v3211 = vsel %vm26, %v3018, 0
  %v3214 = vsel %vm566, %v3020, 0
  %3216 = vmatprep.subr.mxu0 0.0
  %3217 = vmatpush1.msra.mxu0 %v3214
  %3218 = vmatprep.subr.mxu0 0.0
  %3219 = vmatpush1.msra.mxu0 0.0
  %3220 = vmatprep.subr.mxu0 0.0
  %3221 = vmatpush1.msra.mxu0 0.0
  %3222 = vmatprep.subr.mxu0 0.0
  %3223 = vmatpush1.msra.mxu0 0.0
  %3224 = vmatprep.subr.mxu0 0.0
  %3225 = vmatpush1.msra.mxu0 0.0
  %3226 = vmatprep.subr.mxu0 0.0
  %3227 = vmatpush1.msra.mxu0 0.0
  %3228 = vmatprep.subr.mxu0 0.0
  %3229 = vmatpush1.msra.mxu0 0.0
  %3230 = vmatprep.subr.mxu0 0.0
  %3231 = vmatpush1.msra.mxu0 0.0
  %3232 = vmatprep.subr.mxu0 0.0
  %3233 = vmatpush1.msra.mxu0 0.0
  %3234 = vmatprep.subr.mxu0 0.0
  %3235 = vmatpush1.msra.mxu0 0.0
  %3236 = vmatprep.subr.mxu0 0.0
  %3237 = vmatpush1.msra.mxu0 0.0
  %3238 = vmatprep.subr.mxu0 0.0
  %3239 = vmatpush1.msra.mxu0 0.0
  %3240 = vmatprep.subr.mxu0 0.0
  %3241 = vmatpush1.msra.mxu0 0.0
  %3242 = vmatprep.subr.mxu0 0.0
  %3243 = vmatpush1.msra.mxu0 0.0
  %3244 = vmatprep.subr.mxu0 0.0
  %3245 = vmatpush1.msra.mxu0 0.0
  %3246 = vmatprep.subr.mxu0 0.0
  %3247 = vmatpush1.msra.mxu0 0.0
  %3248 = vmatprep.subr.mxu0 0.0
  %3249 = vmatpush1.msra.mxu0 0.0
  %3250 = vmatprep.subr.mxu0 0.0
  %3251 = vmatpush1.msra.mxu0 0.0
  %3252 = vmatprep.subr.mxu0 0.0
  %3253 = vmatpush1.msra.mxu0 0.0
  %3254 = vmatprep.subr.mxu0 0.0
  %3255 = vmatpush1.msra.mxu0 0.0
  %3256 = vmatprep.subr.mxu0 0.0
  %3257 = vmatpush1.msra.mxu0 0.0
  %3258 = vmatprep.subr.mxu0 0.0
  %3259 = vmatpush1.msra.mxu0 0.0
  %3260 = vmatprep.subr.mxu0 0.0
  %3261 = vmatpush1.msra.mxu0 0.0
  %3262 = vmatprep.subr.mxu0 0.0
  %3263 = vmatpush1.msra.mxu0 0.0
  %3264 = vmatprep.subr.mxu0 0.0
  %3265 = vmatpush1.msra.mxu0 0.0
  %3266 = vmatprep.subr.mxu0 0.0
  %3267 = vmatpush1.msra.mxu0 0.0
  %3268 = vmatprep.subr.mxu0 0.0
  %3269 = vmatpush1.msra.mxu0 0.0
  %3270 = vmatprep.subr.mxu0 0.0
  %3271 = vmatpush1.msra.mxu0 0.0
  %3272 = vmatprep.subr.mxu0 0.0
  %3273 = vmatpush1.msra.mxu0 0.0
  %3274 = vmatprep.subr.mxu0 0.0
  %3275 = vmatpush1.msra.mxu0 0.0
  %3276 = vmatprep.subr.mxu0 0.0
  %3277 = vmatpush1.msra.mxu0 0.0
  %3278 = vmatprep.subr.mxu0 0.0
  %3279 = vmatpush1.msra.mxu0 0.0
  %3280 = vmatprep.mubr.f32.mxu0 0.0
  %3281 = vmatmul.mubr.f32.gmra.mrb[0].mxu0 %v3022
  %v3282 = vpop.f32.mrb[0].mxu0
  %v3283 = vadd.f32 0.0, %v3282
  %v3284 = vpop.f32.mrb[0].mxu0
  %3285 = vmatprep.mubr.f32.mxu0 0.0
  %3286 = vmatmul.mubr.f32.gmra.mrb[0].mxu0 %v3025
  %v3287 = vpop.f32.mrb[0].mxu0
  %v3288 = vadd.f32 0.0, %v3287
  %v3289 = vpop.f32.mrb[0].mxu0
  %3290 = vmatprep.mubr.f32.mxu0 0.0
  %3291 = vmatmul.mubr.f32.gmra.mrb[0].mxu0 %v3028
  %v3292 = vpop.f32.mrb[0].mxu0
  %v3293 = vadd.f32 0.0, %v3292
  %v3294 = vpop.f32.mrb[0].mxu0
  %3295 = vmatprep.mubr.f32.mxu0 0.0
  %3296 = vmatmul.mubr.f32.gmra.mrb[0].mxu0 %v3031
  %v3297 = vpop.f32.mrb[0].mxu0
  %v3298 = vadd.f32 0.0, %v3297
  %v3299 = vpop.f32.mrb[0].mxu0
  %3300 = vmatprep.mubr.f32.mxu0 0.0
  %3301 = vmatmul.mubr.f32.gmra.mrb[0].mxu0 %v3034
  %v3302 = vpop.f32.mrb[0].mxu0
  %v3303 = vadd.f32 0.0, %v3302
  %v3304 = vpop.f32.mrb[0].mxu0
  %3305 = vmatprep.mubr.f32.mxu0 0.0
  %3306 = vmatmul.mubr.f32.gmra.mrb[0].mxu0 %v3037
  %v3307 = vpop.f32.mrb[0].mxu0
  %v3308 = vadd.f32 0.0, %v3307
  %v3309 = vpop.f32.mrb[0].mxu0
  %3310 = vmatprep.mubr.f32.mxu0 0.0
  %3311 = vmatmul.mubr.f32.gmra.mrb[0].mxu0 %v3040
  %v3312 = vpop.f32.mrb[0].mxu0
  %v3313 = vadd.f32 0.0, %v3312
  %v3314 = vpop.f32.mrb[0].mxu0
  %3315 = vmatprep.mubr.f32.mxu0 0.0
  %3316 = vmatmul.mubr.f32.gmra.mrb[0].mxu0 %v3043
  %v3317 = vpop.f32.mrb[0].mxu0
  %v3318 = vadd.f32 0.0, %v3317
  %v3319 = vpop.f32.mrb[0].mxu0
  %3320 = vmatprep.mubr.f32.mxu0 0.0
  %3321 = vmatmul.mubr.f32.gmra.mrb[0].mxu0 %v3046
  %v3322 = vpop.f32.mrb[0].mxu0
  %v3323 = vadd.f32 0.0, %v3322
  %v3324 = vpop.f32.mrb[0].mxu0
  %3325 = vmatprep.mubr.f32.mxu0 0.0
  %3326 = vmatmul.mubr.f32.gmra.mrb[0].mxu0 %v3049
  %v3327 = vpop.f32.mrb[0].mxu0
  %v3328 = vadd.f32 0.0, %v3327
  %v3329 = vpop.f32.mrb[0].mxu0
  %3330 = vmatprep.mubr.f32.mxu0 0.0
  %3331 = vmatmul.mubr.f32.gmra.mrb[0].mxu0 %v3052
  %v3332 = vpop.f32.mrb[0].mxu0
  %v3333 = vadd.f32 0.0, %v3332
  %v3334 = vpop.f32.mrb[0].mxu0
  %3335 = vmatprep.mubr.f32.mxu0 0.0
  %3336 = vmatmul.mubr.f32.gmra.mrb[0].mxu0 %v3055
  %v3337 = vpop.f32.mrb[0].mxu0
  %v3338 = vadd.f32 0.0, %v3337
  %v3339 = vpop.f32.mrb[0].mxu0
  %3340 = vmatprep.mubr.f32.mxu0 0.0
  %3341 = vmatmul.mubr.f32.gmra.mrb[0].mxu0 %v3058
  %v3342 = vpop.f32.mrb[0].mxu0
  %v3343 = vadd.f32 0.0, %v3342
  %v3344 = vpop.f32.mrb[0].mxu0
  %3345 = vmatprep.mubr.f32.mxu0 0.0
  %3346 = vmatmul.mubr.f32.gmra.mrb[0].mxu0 %v3061
  %v3347 = vpop.f32.mrb[0].mxu0
  %v3348 = vadd.f32 0.0, %v3347
  %v3349 = vpop.f32.mrb[0].mxu0
  %3350 = vmatprep.mubr.f32.mxu0 0.0
  %3351 = vmatmul.mubr.f32.gmra.mrb[0].mxu0 %v3064
  %v3352 = vpop.f32.mrb[0].mxu0
  %v3353 = vadd.f32 0.0, %v3352
  %v3354 = vpop.f32.mrb[0].mxu0
  %3355 = vmatprep.mubr.f32.mxu0 0.0
  %3356 = vmatmul.mubr.f32.gmra.mrb[0].mxu0 %v3067
  %v3357 = vpop.f32.mrb[0].mxu0
  %v3358 = vadd.f32 0.0, %v3357
  %v3359 = vpop.f32.mrb[0].mxu0
  %3360 = vmatprep.mubr.f32.mxu0 0.0
  %3361 = vmatmul.mubr.f32.gmra.mrb[0].mxu0 %v3070
  %v3362 = vpop.f32.mrb[0].mxu0
  %v3363 = vadd.f32 0.0, %v3362
  %v3364 = vpop.f32.mrb[0].mxu0
  %3365 = vmatprep.mubr.f32.mxu0 0.0
  %3366 = vmatmul.mubr.f32.gmra.mrb[0].mxu0 %v3073
  %v3367 = vpop.f32.mrb[0].mxu0
  %v3368 = vadd.f32 0.0, %v3367
  %v3369 = vpop.f32.mrb[0].mxu0
  %3370 = vmatprep.mubr.f32.mxu0 0.0
  %3371 = vmatmul.mubr.f32.gmra.mrb[0].mxu0 %v3076
  %v3372 = vpop.f32.mrb[0].mxu0
  %v3373 = vadd.f32 0.0, %v3372
  %v3374 = vpop.f32.mrb[0].mxu0
  %3375 = vmatprep.mubr.f32.mxu0 0.0
  %3376 = vmatmul.mubr.f32.gmra.mrb[0].mxu0 %v3079
  %v3377 = vpop.f32.mrb[0].mxu0
  %v3378 = vadd.f32 0.0, %v3377
  %v3379 = vpop.f32.mrb[0].mxu0
  %3380 = vmatprep.mubr.f32.mxu0 0.0
  %3381 = vmatmul.mubr.f32.gmra.mrb[0].mxu0 %v3082
  %v3382 = vpop.f32.mrb[0].mxu0
  %v3383 = vadd.f32 0.0, %v3382
  %v3384 = vpop.f32.mrb[0].mxu0
  %3385 = vmatprep.mubr.f32.mxu0 0.0
  %3386 = vmatmul.mubr.f32.gmra.mrb[0].mxu0 %v3085
  %v3387 = vpop.f32.mrb[0].mxu0
  %v3388 = vadd.f32 0.0, %v3387
  %v3389 = vpop.f32.mrb[0].mxu0
  %3390 = vmatprep.mubr.f32.mxu0 0.0
  %3391 = vmatmul.mubr.f32.gmra.mrb[0].mxu0 %v3088
  %v3392 = vpop.f32.mrb[0].mxu0
  %v3393 = vadd.f32 0.0, %v3392
  %v3394 = vpop.f32.mrb[0].mxu0
  %3395 = vmatprep.mubr.f32.mxu0 0.0
  %3396 = vmatmul.mubr.f32.gmra.mrb[0].mxu0 %v3091
  %v3397 = vpop.f32.mrb[0].mxu0
  %v3398 = vadd.f32 0.0, %v3397
  %v3399 = vpop.f32.mrb[0].mxu0
  %3400 = vmatprep.mubr.f32.mxu0 0.0
  %3401 = vmatmul.mubr.f32.gmra.mrb[0].mxu0 %v3094
  %v3402 = vpop.f32.mrb[0].mxu0
  %v3403 = vadd.f32 0.0, %v3402
  %v3404 = vpop.f32.mrb[0].mxu0
  %3405 = vmatprep.mubr.f32.mxu0 0.0
  %3406 = vmatmul.mubr.f32.gmra.mrb[0].mxu0 %v3097
  %v3407 = vpop.f32.mrb[0].mxu0
  %v3408 = vadd.f32 0.0, %v3407
  %v3409 = vpop.f32.mrb[0].mxu0
  %3410 = vmatprep.mubr.f32.mxu0 0.0
  %3411 = vmatmul.mubr.f32.gmra.mrb[0].mxu0 %v3100
  %v3412 = vpop.f32.mrb[0].mxu0
  %v3413 = vadd.f32 0.0, %v3412
  %v3414 = vpop.f32.mrb[0].mxu0
  %3415 = vmatprep.mubr.f32.mxu0 0.0
  %3416 = vmatmul.mubr.f32.gmra.mrb[0].mxu0 %v3103
  %v3417 = vpop.f32.mrb[0].mxu0
  %v3418 = vadd.f32 0.0, %v3417
  %v3419 = vpop.f32.mrb[0].mxu0
  %3420 = vmatprep.mubr.f32.mxu0 0.0
  %3421 = vmatmul.mubr.f32.gmra.mrb[0].mxu0 %v3106
  %v3422 = vpop.f32.mrb[0].mxu0
  %v3423 = vadd.f32 0.0, %v3422
  %v3424 = vpop.f32.mrb[0].mxu0
  %3425 = vmatprep.mubr.f32.mxu0 0.0
  %3426 = vmatmul.mubr.f32.gmra.mrb[0].mxu0 %v3109
  %v3427 = vpop.f32.mrb[0].mxu0
  %v3428 = vadd.f32 0.0, %v3427
  %v3429 = vpop.f32.mrb[0].mxu0
  %3430 = vmatprep.mubr.f32.mxu0 0.0
  %3431 = vmatmul.mubr.f32.gmra.mrb[0].mxu0 %v3112
  %v3432 = vpop.f32.mrb[0].mxu0
  %v3433 = vadd.f32 0.0, %v3432
  %v3434 = vpop.f32.mrb[0].mxu0
  %3435 = vmatprep.mubr.f32.mxu0 0.0
  %3436 = vmatmul.mubr.f32.gmra.mrb[0].mxu0 %v3115
  %v3437 = vpop.f32.mrb[0].mxu0
  %v3438 = vadd.f32 0.0, %v3437
  %v3439 = vpop.f32.mrb[0].mxu0
  %3440 = vmatprep.mubr.f32.mxu0 0.0
  %3441 = vmatmul.mubr.f32.gmra.mrb[0].mxu0 %v3118
  %v3442 = vpop.f32.mrb[0].mxu0
  %v3443 = vadd.f32 0.0, %v3442
  %v3444 = vpop.f32.mrb[0].mxu0
  %3445 = vmatprep.mubr.f32.mxu0 0.0
  %3446 = vmatmul.mubr.f32.gmra.mrb[0].mxu0 %v3121
  %v3447 = vpop.f32.mrb[0].mxu0
  %v3448 = vadd.f32 0.0, %v3447
  %v3449 = vpop.f32.mrb[0].mxu0
  %3450 = vmatprep.mubr.f32.mxu0 0.0
  %3451 = vmatmul.mubr.f32.gmra.mrb[0].mxu0 %v3124
  %v3452 = vpop.f32.mrb[0].mxu0
  %v3453 = vadd.f32 0.0, %v3452
  %v3454 = vpop.f32.mrb[0].mxu0
  %3455 = vmatprep.mubr.f32.mxu0 0.0
  %3456 = vmatmul.mubr.f32.gmra.mrb[0].mxu0 %v3127
  %v3457 = vpop.f32.mrb[0].mxu0
  %v3458 = vadd.f32 0.0, %v3457
  %v3459 = vpop.f32.mrb[0].mxu0
  %3460 = vmatprep.mubr.f32.mxu0 0.0
  %3461 = vmatmul.mubr.f32.gmra.mrb[0].mxu0 %v3130
  %v3462 = vpop.f32.mrb[0].mxu0
  %v3463 = vadd.f32 0.0, %v3462
  %v3464 = vpop.f32.mrb[0].mxu0
  %3465 = vmatprep.mubr.f32.mxu0 0.0
  %3466 = vmatmul.mubr.f32.gmra.mrb[0].mxu0 %v3133
  %v3467 = vpop.f32.mrb[0].mxu0
  %v3468 = vadd.f32 0.0, %v3467
  %v3469 = vpop.f32.mrb[0].mxu0
  %3470 = vmatprep.mubr.f32.mxu0 0.0
  %3471 = vmatmul.mubr.f32.gmra.mrb[0].mxu0 %v3136
  %v3472 = vpop.f32.mrb[0].mxu0
  %v3473 = vadd.f32 0.0, %v3472
  %v3474 = vpop.f32.mrb[0].mxu0
  %3475 = vmatprep.mubr.f32.mxu0 0.0
  %3476 = vmatmul.mubr.f32.gmra.mrb[0].mxu0 %v3139
  %v3477 = vpop.f32.mrb[0].mxu0
  %v3478 = vadd.f32 0.0, %v3477
  %v3479 = vpop.f32.mrb[0].mxu0
  %3480 = vmatprep.mubr.f32.mxu0 0.0
  %3481 = vmatmul.mubr.f32.gmra.mrb[0].mxu0 %v3142
  %v3482 = vpop.f32.mrb[0].mxu0
  %v3483 = vadd.f32 0.0, %v3482
  %v3484 = vpop.f32.mrb[0].mxu0
  %3485 = vmatprep.mubr.f32.mxu0 0.0
  %3486 = vmatmul.mubr.f32.gmra.mrb[0].mxu0 %v3145
  %v3487 = vpop.f32.mrb[0].mxu0
  %v3488 = vadd.f32 0.0, %v3487
  %v3489 = vpop.f32.mrb[0].mxu0
  %3490 = vmatprep.mubr.f32.mxu0 0.0
  %3491 = vmatmul.mubr.f32.gmra.mrb[0].mxu0 %v3148
  %v3492 = vpop.f32.mrb[0].mxu0
  %v3493 = vadd.f32 0.0, %v3492
  %v3494 = vpop.f32.mrb[0].mxu0
  %3495 = vmatprep.mubr.f32.mxu0 0.0
  %3496 = vmatmul.mubr.f32.gmra.mrb[0].mxu0 %v3151
  %v3497 = vpop.f32.mrb[0].mxu0
  %v3498 = vadd.f32 0.0, %v3497
  %v3499 = vpop.f32.mrb[0].mxu0
  %3500 = vmatprep.mubr.f32.mxu0 0.0
  %3501 = vmatmul.mubr.f32.gmra.mrb[0].mxu0 %v3154
  %v3502 = vpop.f32.mrb[0].mxu0
  %v3503 = vadd.f32 0.0, %v3502
  %v3504 = vpop.f32.mrb[0].mxu0
  %3505 = vmatprep.mubr.f32.mxu0 0.0
  %3506 = vmatmul.mubr.f32.gmra.mrb[0].mxu0 %v3157
  %v3507 = vpop.f32.mrb[0].mxu0
  %v3508 = vadd.f32 0.0, %v3507
  %v3509 = vpop.f32.mrb[0].mxu0
  %3510 = vmatprep.mubr.f32.mxu0 0.0
  %3511 = vmatmul.mubr.f32.gmra.mrb[0].mxu0 %v3160
  %v3512 = vpop.f32.mrb[0].mxu0
  %v3513 = vadd.f32 0.0, %v3512
  %v3514 = vpop.f32.mrb[0].mxu0
  %3515 = vmatprep.mubr.f32.mxu0 0.0
  %3516 = vmatmul.mubr.f32.gmra.mrb[0].mxu0 %v3163
  %v3517 = vpop.f32.mrb[0].mxu0
  %v3518 = vadd.f32 0.0, %v3517
  %v3519 = vpop.f32.mrb[0].mxu0
  %3520 = vmatprep.mubr.f32.mxu0 0.0
  %3521 = vmatmul.mubr.f32.gmra.mrb[0].mxu0 %v3166
  %v3522 = vpop.f32.mrb[0].mxu0
  %v3523 = vadd.f32 0.0, %v3522
  %v3524 = vpop.f32.mrb[0].mxu0
  %3525 = vmatprep.mubr.f32.mxu0 0.0
  %3526 = vmatmul.mubr.f32.gmra.mrb[0].mxu0 %v3169
  %v3527 = vpop.f32.mrb[0].mxu0
  %v3528 = vadd.f32 0.0, %v3527
  %v3529 = vpop.f32.mrb[0].mxu0
  %3530 = vmatprep.mubr.f32.mxu0 0.0
  %3531 = vmatmul.mubr.f32.gmra.mrb[0].mxu0 %v3172
  %v3532 = vpop.f32.mrb[0].mxu0
  %v3533 = vadd.f32 0.0, %v3532
  %v3534 = vpop.f32.mrb[0].mxu0
  %3535 = vmatprep.mubr.f32.mxu0 0.0
  %3536 = vmatmul.mubr.f32.gmra.mrb[0].mxu0 %v3175
  %v3537 = vpop.f32.mrb[0].mxu0
  %v3538 = vadd.f32 0.0, %v3537
  %v3539 = vpop.f32.mrb[0].mxu0
  %3540 = vmatprep.mubr.f32.mxu0 0.0
  %3541 = vmatmul.mubr.f32.gmra.mrb[0].mxu0 %v3178
  %v3542 = vpop.f32.mrb[0].mxu0
  %v3543 = vadd.f32 0.0, %v3542
  %v3544 = vpop.f32.mrb[0].mxu0
  %3545 = vmatprep.mubr.f32.mxu0 0.0
  %3546 = vmatmul.mubr.f32.gmra.mrb[0].mxu0 %v3181
  %v3547 = vpop.f32.mrb[0].mxu0
  %v3548 = vadd.f32 0.0, %v3547
  %v3549 = vpop.f32.mrb[0].mxu0
  %3550 = vmatprep.mubr.f32.mxu0 0.0
  %3551 = vmatmul.mubr.f32.gmra.mrb[0].mxu0 %v3184
  %v3552 = vpop.f32.mrb[0].mxu0
  %v3553 = vadd.f32 0.0, %v3552
  %v3554 = vpop.f32.mrb[0].mxu0
  %3555 = vmatprep.mubr.f32.mxu0 0.0
  %3556 = vmatmul.mubr.f32.gmra.mrb[0].mxu0 %v3187
  %v3557 = vpop.f32.mrb[0].mxu0
  %v3558 = vadd.f32 0.0, %v3557
  %v3559 = vpop.f32.mrb[0].mxu0
  %3560 = vmatprep.mubr.f32.mxu0 0.0
  %3561 = vmatmul.mubr.f32.gmra.mrb[0].mxu0 %v3190
  %v3562 = vpop.f32.mrb[0].mxu0
  %v3563 = vadd.f32 0.0, %v3562
  %v3564 = vpop.f32.mrb[0].mxu0
  %3565 = vmatprep.mubr.f32.mxu0 0.0
  %3566 = vmatmul.mubr.f32.gmra.mrb[0].mxu0 %v3193
  %v3567 = vpop.f32.mrb[0].mxu0
  %v3568 = vadd.f32 0.0, %v3567
  %v3569 = vpop.f32.mrb[0].mxu0
  %3570 = vmatprep.mubr.f32.mxu0 0.0
  %3571 = vmatmul.mubr.f32.gmra.mrb[0].mxu0 %v3196
  %v3572 = vpop.f32.mrb[0].mxu0
  %v3573 = vadd.f32 0.0, %v3572
  %v3574 = vpop.f32.mrb[0].mxu0
  %3575 = vmatprep.mubr.f32.mxu0 0.0
  %3576 = vmatmul.mubr.f32.gmra.mrb[0].mxu0 %v3199
  %v3577 = vpop.f32.mrb[0].mxu0
  %v3578 = vadd.f32 0.0, %v3577
  %v3579 = vpop.f32.mrb[0].mxu0
  %3580 = vmatprep.mubr.f32.mxu0 0.0
  %3581 = vmatmul.mubr.f32.gmra.mrb[0].mxu0 %v3202
  %v3582 = vpop.f32.mrb[0].mxu0
  %v3583 = vadd.f32 0.0, %v3582
  %v3584 = vpop.f32.mrb[0].mxu0
  %3585 = vmatprep.mubr.f32.mxu0 0.0
  %3586 = vmatmul.mubr.f32.gmra.mrb[0].mxu0 %v3205
  %v3587 = vpop.f32.mrb[0].mxu0
  %v3588 = vadd.f32 0.0, %v3587
  %v3589 = vpop.f32.mrb[0].mxu0
  %3590 = vmatprep.mubr.f32.mxu0 0.0
  %3591 = vmatmul.mubr.f32.gmra.mrb[0].mxu0 %v3208
  %v3592 = vpop.f32.mrb[0].mxu0
  %v3593 = vadd.f32 0.0, %v3592
  %v3594 = vpop.f32.mrb[0].mxu0
  %3595 = vmatprep.mubr.f32.mxu0 0.0
  %3596 = vmatmul.mubr.f32.gmra.mrb[0].mxu0 %v3211
  %v3597 = vpop.f32.mrb[0].mxu0
  %v3598 = vadd.f32 0.0, %v3597
  %v3599 = vpop.f32.mrb[0].mxu0
  %3600 = vdwg.mxu0
  %v3601 = vadd.f32 %v2891, %v3283
  %v3602 = vadd.f32 %v2892, %v3288
  %v3603 = vadd.f32 %v2893, %v3293
  %v3604 = vadd.f32 %v2894, %v3298
  %v3605 = vadd.f32 %v2895, %v3303
  %v3606 = vadd.f32 %v2896, %v3308
  %v3607 = vadd.f32 %v2897, %v3313
  %v3608 = vadd.f32 %v2898, %v3318
  %v3609 = vadd.f32 %v2899, %v3323
  %v3610 = vadd.f32 %v2900, %v3328
  %v3611 = vadd.f32 %v2901, %v3333
  %v3612 = vadd.f32 %v2902, %v3338
  %v3613 = vadd.f32 %v2903, %v3343
  %v3614 = vadd.f32 %v2904, %v3348
  %v3615 = vadd.f32 %v2905, %v3353
  %v3616 = vadd.f32 %v2906, %v3358
  %v3617 = vadd.f32 %v2907, %v3363
  %v3618 = vadd.f32 %v2908, %v3368
  %v3619 = vadd.f32 %v2909, %v3373
  %v3620 = vadd.f32 %v2910, %v3378
  %v3621 = vadd.f32 %v2911, %v3383
  %v3622 = vadd.f32 %v2912, %v3388
  %v3623 = vadd.f32 %v2913, %v3393
  %v3624 = vadd.f32 %v2914, %v3398
  %v3625 = vadd.f32 %v2915, %v3403
  %v3626 = vadd.f32 %v2916, %v3408
  %v3627 = vadd.f32 %v2917, %v3413
  %v3628 = vadd.f32 %v2918, %v3418
  %v3629 = vadd.f32 %v2919, %v3423
  %v3630 = vadd.f32 %v2920, %v3428
  %v3631 = vadd.f32 %v2921, %v3433
  %v3632 = vadd.f32 %v2922, %v3438
  %v3633 = vadd.f32 %v2923, %v3443
  %v3634 = vadd.f32 %v2924, %v3448
  %v3635 = vadd.f32 %v2925, %v3453
  %v3636 = vadd.f32 %v2926, %v3458
  %v3637 = vadd.f32 %v2927, %v3463
  %v3638 = vadd.f32 %v2928, %v3468
  %v3639 = vadd.f32 %v2929, %v3473
  %v3640 = vadd.f32 %v2930, %v3478
  %v3641 = vadd.f32 %v2931, %v3483
  %v3642 = vadd.f32 %v2932, %v3488
  %v3643 = vadd.f32 %v2933, %v3493
  %v3644 = vadd.f32 %v2934, %v3498
  %v3645 = vadd.f32 %v2935, %v3503
  %v3646 = vadd.f32 %v2936, %v3508
  %v3647 = vadd.f32 %v2937, %v3513
  %v3648 = vadd.f32 %v2938, %v3518
  %v3649 = vadd.f32 %v2939, %v3523
  %v3650 = vadd.f32 %v2940, %v3528
  %v3651 = vadd.f32 %v2941, %v3533
  %v3652 = vadd.f32 %v2942, %v3538
  %v3653 = vadd.f32 %v2943, %v3543
  %v3654 = vadd.f32 %v2944, %v3548
  %v3655 = vadd.f32 %v2945, %v3553
  %v3656 = vadd.f32 %v2946, %v3558
  %v3657 = vadd.f32 %v2947, %v3563
  %v3658 = vadd.f32 %v2948, %v3568
  %v3659 = vadd.f32 %v2949, %v3573
  %v3660 = vadd.f32 %v2950, %v3578
  %v3661 = vadd.f32 %v2951, %v3583
  %v3662 = vadd.f32 %v2952, %v3588
  %v3663 = vadd.f32 %v2953, %v3593
  %v3664 = vadd.f32 %v2954, %v3598
  %v3665 = vld [vmem:[%s178 + $0x2] sm:$0xff]
  %v3666 = vld [vmem:[%s178 + $0xa] sm:$0xff]
  %v3667 = vld [vmem:[%s178 + $0x1a] sm:$0xff]
  %v3668 = vld [vmem:[%s178 + $0x22] sm:$0xff]
  %v3669 = vld [vmem:[%s178 + $0x32] sm:$0xff]
  %v3670 = vld [vmem:[%s178 + $0x3a] sm:$0xff]
  %v3671 = vld [vmem:[%s178 + $0x4a] sm:$0xff]
  %v3672 = vld [vmem:[%s178 + $0x52] sm:$0xff]
  %v3673 = vld [vmem:[%s178 + $0x62] sm:$0xff]
  %v3674 = vld [vmem:[%s178 + $0x6a] sm:$0xff]
  %v3675 = vld [vmem:[%s178 + $0x7a] sm:$0xff]
  %v3676 = vld [vmem:[%s178 + $0x82] sm:$0xff]
  %v3677 = vld [vmem:[%s178 + $0x92] sm:$0xff]
  %v3678 = vld [vmem:[%s178 + $0x9a] sm:$0xff]
  %v3679 = vld [vmem:[%s178 + $0xaa] sm:$0xff]
  %v3680 = vld [vmem:[%s178 + $0xb2] sm:$0xff]
  %v3681 = vld [vmem:[%s178 + $0xc2] sm:$0xff]
  %v3682 = vld [vmem:[%s178 + $0xca] sm:$0xff]
  %v3683 = vld [vmem:[%s178 + $0xda] sm:$0xff]
  %v3684 = vld [vmem:[%s178 + $0xe2] sm:$0xff]
  %v3685 = vld [vmem:[%s178 + $0xf2] sm:$0xff]
  %v3686 = vld [vmem:[%s178 + $0xfa] sm:$0xff]
  %v3687 = vld [vmem:[%s178 + $0x10a] sm:$0xff]
  %v3688 = vld [vmem:[%s178 + $0x112] sm:$0xff]
  %v3689 = vld [vmem:[%s178 + $0x122] sm:$0xff]
  %v3690 = vld [vmem:[%s178 + $0x12a] sm:$0xff]
  %v3691 = vld [vmem:[%s178 + $0x13a] sm:$0xff]
  %v3692 = vld [vmem:[%s178 + $0x142] sm:$0xff]
  %v3693 = vld [vmem:[%s178 + $0x152] sm:$0xff]
  %v3694 = vld [vmem:[%s178 + $0x15a] sm:$0xff]
  %v3695 = vld [vmem:[%s178 + $0x16a] sm:$0xff]
  %v3696 = vld [vmem:[%s178 + $0x172] sm:$0xff]
  %v3697 = vld [vmem:[%s178 + $0x1b2] sm:$0xff]
  %v3698 = vld [vmem:[%s178 + $0x1ba] sm:$0xff]
  %v3699 = vld [vmem:[%s178 + $0x1ca] sm:$0xff]
  %v3700 = vld [vmem:[%s178 + $0x1d2] sm:$0xff]
  %v3701 = vld [vmem:[%s178 + $0x1e2] sm:$0xff]
  %v3702 = vld [vmem:[%s178 + $0x1ea] sm:$0xff]
  %v3703 = vld [vmem:[%s178 + $0x1fa] sm:$0xff]
  %v3704 = vld [vmem:[%s178 + $0x202] sm:$0xff]
  %v3705 = vld [vmem:[%s178 + $0x212] sm:$0xff]
  %v3706 = vld [vmem:[%s178 + $0x21a] sm:$0xff]
  %v3707 = vld [vmem:[%s178 + $0x22a] sm:$0xff]
  %v3708 = vld [vmem:[%s178 + $0x232] sm:$0xff]
  %v3709 = vld [vmem:[%s178 + $0x242] sm:$0xff]
  %v3710 = vld [vmem:[%s178 + $0x24a] sm:$0xff]
  %v3711 = vld [vmem:[%s178 + $0x25a] sm:$0xff]
  %v3712 = vld [vmem:[%s178 + $0x262] sm:$0xff]
  %v3713 = vld [vmem:[%s178 + $0x272] sm:$0xff]
  %v3714 = vld [vmem:[%s178 + $0x27a] sm:$0xff]
  %v3715 = vld [vmem:[%s178 + $0x28a] sm:$0xff]
  %v3716 = vld [vmem:[%s178 + $0x292] sm:$0xff]
  %v3717 = vld [vmem:[%s178 + $0x2a2] sm:$0xff]
  %v3718 = vld [vmem:[%s178 + $0x2aa] sm:$0xff]
  %v3719 = vld [vmem:[%s178 + $0x2ba] sm:$0xff]
  %v3720 = vld [vmem:[%s178 + $0x2c2] sm:$0xff]
  %v3721 = vld [vmem:[%s178 + $0x2d2] sm:$0xff]
  %v3722 = vld [vmem:[%s178 + $0x2da] sm:$0xff]
  %v3723 = vld [vmem:[%s178 + $0x2ea] sm:$0xff]
  %v3724 = vld [vmem:[%s178 + $0x2f2] sm:$0xff]
  %v3725 = vld [vmem:[%s178 + $0x302] sm:$0xff]
  %v3726 = vld [vmem:[%s178 + $0x30a] sm:$0xff]
  %v3727 = vld [vmem:[%s178 + $0x31a] sm:$0xff]
  %v3728 = vld [vmem:[%s178 + $0x322] sm:$0xff]
  %s3729 = scalar_lea.vmem %s1, 20
  %v3730 = vld [vmem:[%s3729] sm:$0xf]
  %v3732 = vsel %vm26, %v3665, 0
  %v3735 = vsel %vm26, %v3666, 0
  %v3738 = vsel %vm26, %v3667, 0
  %v3741 = vsel %vm26, %v3668, 0
  %v3744 = vsel %vm26, %v3669, 0
  %v3747 = vsel %vm26, %v3670, 0
  %v3750 = vsel %vm26, %v3671, 0
  %v3753 = vsel %vm26, %v3672, 0
  %v3756 = vsel %vm26, %v3673, 0
  %v3759 = vsel %vm26, %v3674, 0
  %v3762 = vsel %vm26, %v3675, 0
  %v3765 = vsel %vm26, %v3676, 0
  %v3768 = vsel %vm26, %v3677, 0
  %v3771 = vsel %vm26, %v3678, 0
  %v3774 = vsel %vm26, %v3679, 0
  %v3777 = vsel %vm26, %v3680, 0
  %v3780 = vsel %vm26, %v3681, 0
  %v3783 = vsel %vm26, %v3682, 0
  %v3786 = vsel %vm26, %v3683, 0
  %v3789 = vsel %vm26, %v3684, 0
  %v3792 = vsel %vm26, %v3685, 0
  %v3795 = vsel %vm26, %v3686, 0
  %v3798 = vsel %vm26, %v3687, 0
  %v3801 = vsel %vm26, %v3688, 0
  %v3804 = vsel %vm26, %v3689, 0
  %v3807 = vsel %vm26, %v3690, 0
  %v3810 = vsel %vm26, %v3691, 0
  %v3813 = vsel %vm26, %v3692, 0
  %v3816 = vsel %vm26, %v3693, 0
  %v3819 = vsel %vm26, %v3694, 0
  %v3822 = vsel %vm26, %v3695, 0
  %v3825 = vsel %vm26, %v3696, 0
  %v3828 = vsel %vm26, %v3697, 0
  %v3831 = vsel %vm26, %v3698, 0
  %v3834 = vsel %vm26, %v3699, 0
  %v3837 = vsel %vm26, %v3700, 0
  %v3840 = vsel %vm26, %v3701, 0
  %v3843 = vsel %vm26, %v3702, 0
  %v3846 = vsel %vm26, %v3703, 0
  %v3849 = vsel %vm26, %v3704, 0
  %v3852 = vsel %vm26, %v3705, 0
  %v3855 = vsel %vm26, %v3706, 0
  %v3858 = vsel %vm26, %v3707, 0
  %v3861 = vsel %vm26, %v3708, 0
  %v3864 = vsel %vm26, %v3709, 0
  %v3867 = vsel %vm26, %v3710, 0
  %v3870 = vsel %vm26, %v3711, 0
  %v3873 = vsel %vm26, %v3712, 0
  %v3876 = vsel %vm26, %v3713, 0
  %v3879 = vsel %vm26, %v3714, 0
  %v3882 = vsel %vm26, %v3715, 0
  %v3885 = vsel %vm26, %v3716, 0
  %v3888 = vsel %vm26, %v3717, 0
  %v3891 = vsel %vm26, %v3718, 0
  %v3894 = vsel %vm26, %v3719, 0
  %v3897 = vsel %vm26, %v3720, 0
  %v3900 = vsel %vm26, %v3721, 0
  %v3903 = vsel %vm26, %v3722, 0
  %v3906 = vsel %vm26, %v3723, 0
  %v3909 = vsel %vm26, %v3724, 0
  %v3912 = vsel %vm26, %v3725, 0
  %v3915 = vsel %vm26, %v3726, 0
  %v3918 = vsel %vm26, %v3727, 0
  %v3921 = vsel %vm26, %v3728, 0
  %v3924 = vsel %vm566, %v3730, 0
  %3926 = vmatprep.subr.mxu0 0.0
  %3927 = vmatpush1.msra.mxu0 %v3924
  %3928 = vmatprep.subr.mxu0 0.0
  %3929 = vmatpush1.msra.mxu0 0.0
  %3930 = vmatprep.subr.mxu0 0.0
  %3931 = vmatpush1.msra.mxu0 0.0
  %3932 = vmatprep.subr.mxu0 0.0
  %3933 = vmatpush1.msra.mxu0 0.0
  %3934 = vmatprep.subr.mxu0 0.0
  %3935 = vmatpush1.msra.mxu0 0.0
  %3936 = vmatprep.subr.mxu0 0.0
  %3937 = vmatpush1.msra.mxu0 0.0
  %3938 = vmatprep.subr.mxu0 0.0
  %3939 = vmatpush1.msra.mxu0 0.0
  %3940 = vmatprep.subr.mxu0 0.0
  %3941 = vmatpush1.msra.mxu0 0.0
  %3942 = vmatprep.subr.mxu0 0.0
  %3943 = vmatpush1.msra.mxu0 0.0
  %3944 = vmatprep.subr.mxu0 0.0
  %3945 = vmatpush1.msra.mxu0 0.0
  %3946 = vmatprep.subr.mxu0 0.0
  %3947 = vmatpush1.msra.mxu0 0.0
  %3948 = vmatprep.subr.mxu0 0.0
  %3949 = vmatpush1.msra.mxu0 0.0
  %3950 = vmatprep.subr.mxu0 0.0
  %3951 = vmatpush1.msra.mxu0 0.0
  %3952 = vmatprep.subr.mxu0 0.0
  %3953 = vmatpush1.msra.mxu0 0.0
  %3954 = vmatprep.subr.mxu0 0.0
  %3955 = vmatpush1.msra.mxu0 0.0
  %3956 = vmatprep.subr.mxu0 0.0
  %3957 = vmatpush1.msra.mxu0 0.0
  %3958 = vmatprep.subr.mxu0 0.0
  %3959 = vmatpush1.msra.mxu0 0.0
  %3960 = vmatprep.subr.mxu0 0.0
  %3961 = vmatpush1.msra.mxu0 0.0
  %3962 = vmatprep.subr.mxu0 0.0
  %3963 = vmatpush1.msra.mxu0 0.0
  %3964 = vmatprep.subr.mxu0 0.0
  %3965 = vmatpush1.msra.mxu0 0.0
  %3966 = vmatprep.subr.mxu0 0.0
  %3967 = vmatpush1.msra.mxu0 0.0
  %3968 = vmatprep.subr.mxu0 0.0
  %3969 = vmatpush1.msra.mxu0 0.0
  %3970 = vmatprep.subr.mxu0 0.0
  %3971 = vmatpush1.msra.mxu0 0.0
  %3972 = vmatprep.subr.mxu0 0.0
  %3973 = vmatpush1.msra.mxu0 0.0
  %3974 = vmatprep.subr.mxu0 0.0
  %3975 = vmatpush1.msra.mxu0 0.0
  %3976 = vmatprep.subr.mxu0 0.0
  %3977 = vmatpush1.msra.mxu0 0.0
  %3978 = vmatprep.subr.mxu0 0.0
  %3979 = vmatpush1.msra.mxu0 0.0
  %3980 = vmatprep.subr.mxu0 0.0
  %3981 = vmatpush1.msra.mxu0 0.0
  %3982 = vmatprep.subr.mxu0 0.0
  %3983 = vmatpush1.msra.mxu0 0.0
  %3984 = vmatprep.subr.mxu0 0.0
  %3985 = vmatpush1.msra.mxu0 0.0
  %3986 = vmatprep.subr.mxu0 0.0
  %3987 = vmatpush1.msra.mxu0 0.0
  %3988 = vmatprep.subr.mxu0 0.0
  %3989 = vmatpush1.msra.mxu0 0.0
  %3990 = vmatprep.mubr.f32.mxu0 0.0
  %3991 = vmatmul.mubr.f32.gmra.mrb[0].mxu0 %v3732
  %v3992 = vpop.f32.mrb[0].mxu0
  %v3993 = vadd.f32 0.0, %v3992
  %v3994 = vpop.f32.mrb[0].mxu0
  %3995 = vmatprep.mubr.f32.mxu0 0.0
  %3996 = vmatmul.mubr.f32.gmra.mrb[0].mxu0 %v3735
  %v3997 = vpop.f32.mrb[0].mxu0
  %v3998 = vadd.f32 0.0, %v3997
  %v3999 = vpop.f32.mrb[0].mxu0
  %4000 = vmatprep.mubr.f32.mxu0 0.0
  %4001 = vmatmul.mubr.f32.gmra.mrb[0].mxu0 %v3738
  %v4002 = vpop.f32.mrb[0].mxu0
  %v4003 = vadd.f32 0.0, %v4002
  %v4004 = vpop.f32.mrb[0].mxu0
  %4005 = vmatprep.mubr.f32.mxu0 0.0
  %4006 = vmatmul.mubr.f32.gmra.mrb[0].mxu0 %v3741
  %v4007 = vpop.f32.mrb[0].mxu0
  %v4008 = vadd.f32 0.0, %v4007
  %v4009 = vpop.f32.mrb[0].mxu0
  %4010 = vmatprep.mubr.f32.mxu0 0.0
  %4011 = vmatmul.mubr.f32.gmra.mrb[0].mxu0 %v3744
  %v4012 = vpop.f32.mrb[0].mxu0
  %v4013 = vadd.f32 0.0, %v4012
  %v4014 = vpop.f32.mrb[0].mxu0
  %4015 = vmatprep.mubr.f32.mxu0 0.0
  %4016 = vmatmul.mubr.f32.gmra.mrb[0].mxu0 %v3747
  %v4017 = vpop.f32.mrb[0].mxu0
  %v4018 = vadd.f32 0.0, %v4017
  %v4019 = vpop.f32.mrb[0].mxu0
  %4020 = vmatprep.mubr.f32.mxu0 0.0
  %4021 = vmatmul.mubr.f32.gmra.mrb[0].mxu0 %v3750
  %v4022 = vpop.f32.mrb[0].mxu0
  %v4023 = vadd.f32 0.0, %v4022
  %v4024 = vpop.f32.mrb[0].mxu0
  %4025 = vmatprep.mubr.f32.mxu0 0.0
  %4026 = vmatmul.mubr.f32.gmra.mrb[0].mxu0 %v3753
  %v4027 = vpop.f32.mrb[0].mxu0
  %v4028 = vadd.f32 0.0, %v4027
  %v4029 = vpop.f32.mrb[0].mxu0
  %4030 = vmatprep.mubr.f32.mxu0 0.0
  %4031 = vmatmul.mubr.f32.gmra.mrb[0].mxu0 %v3756
  %v4032 = vpop.f32.mrb[0].mxu0
  %v4033 = vadd.f32 0.0, %v4032
  %v4034 = vpop.f32.mrb[0].mxu0
  %4035 = vmatprep.mubr.f32.mxu0 0.0
  %4036 = vmatmul.mubr.f32.gmra.mrb[0].mxu0 %v3759
  %v4037 = vpop.f32.mrb[0].mxu0
  %v4038 = vadd.f32 0.0, %v4037
  %v4039 = vpop.f32.mrb[0].mxu0
  %4040 = vmatprep.mubr.f32.mxu0 0.0
  %4041 = vmatmul.mubr.f32.gmra.mrb[0].mxu0 %v3762
  %v4042 = vpop.f32.mrb[0].mxu0
  %v4043 = vadd.f32 0.0, %v4042
  %v4044 = vpop.f32.mrb[0].mxu0
  %4045 = vmatprep.mubr.f32.mxu0 0.0
  %4046 = vmatmul.mubr.f32.gmra.mrb[0].mxu0 %v3765
  %v4047 = vpop.f32.mrb[0].mxu0
  %v4048 = vadd.f32 0.0, %v4047
  %v4049 = vpop.f32.mrb[0].mxu0
  %4050 = vmatprep.mubr.f32.mxu0 0.0
  %4051 = vmatmul.mubr.f32.gmra.mrb[0].mxu0 %v3768
  %v4052 = vpop.f32.mrb[0].mxu0
  %v4053 = vadd.f32 0.0, %v4052
  %v4054 = vpop.f32.mrb[0].mxu0
  %4055 = vmatprep.mubr.f32.mxu0 0.0
  %4056 = vmatmul.mubr.f32.gmra.mrb[0].mxu0 %v3771
  %v4057 = vpop.f32.mrb[0].mxu0
  %v4058 = vadd.f32 0.0, %v4057
  %v4059 = vpop.f32.mrb[0].mxu0
  %4060 = vmatprep.mubr.f32.mxu0 0.0
  %4061 = vmatmul.mubr.f32.gmra.mrb[0].mxu0 %v3774
  %v4062 = vpop.f32.mrb[0].mxu0
  %v4063 = vadd.f32 0.0, %v4062
  %v4064 = vpop.f32.mrb[0].mxu0
  %4065 = vmatprep.mubr.f32.mxu0 0.0
  %4066 = vmatmul.mubr.f32.gmra.mrb[0].mxu0 %v3777
  %v4067 = vpop.f32.mrb[0].mxu0
  %v4068 = vadd.f32 0.0, %v4067
  %v4069 = vpop.f32.mrb[0].mxu0
  %4070 = vmatprep.mubr.f32.mxu0 0.0
  %4071 = vmatmul.mubr.f32.gmra.mrb[0].mxu0 %v3780
  %v4072 = vpop.f32.mrb[0].mxu0
  %v4073 = vadd.f32 0.0, %v4072
  %v4074 = vpop.f32.mrb[0].mxu0
  %4075 = vmatprep.mubr.f32.mxu0 0.0
  %4076 = vmatmul.mubr.f32.gmra.mrb[0].mxu0 %v3783
  %v4077 = vpop.f32.mrb[0].mxu0
  %v4078 = vadd.f32 0.0, %v4077
  %v4079 = vpop.f32.mrb[0].mxu0
  %4080 = vmatprep.mubr.f32.mxu0 0.0
  %4081 = vmatmul.mubr.f32.gmra.mrb[0].mxu0 %v3786
  %v4082 = vpop.f32.mrb[0].mxu0
  %v4083 = vadd.f32 0.0, %v4082
  %v4084 = vpop.f32.mrb[0].mxu0
  %4085 = vmatprep.mubr.f32.mxu0 0.0
  %4086 = vmatmul.mubr.f32.gmra.mrb[0].mxu0 %v3789
  %v4087 = vpop.f32.mrb[0].mxu0
  %v4088 = vadd.f32 0.0, %v4087
  %v4089 = vpop.f32.mrb[0].mxu0
  %4090 = vmatprep.mubr.f32.mxu0 0.0
  %4091 = vmatmul.mubr.f32.gmra.mrb[0].mxu0 %v3792
  %v4092 = vpop.f32.mrb[0].mxu0
  %v4093 = vadd.f32 0.0, %v4092
  %v4094 = vpop.f32.mrb[0].mxu0
  %4095 = vmatprep.mubr.f32.mxu0 0.0
  %4096 = vmatmul.mubr.f32.gmra.mrb[0].mxu0 %v3795
  %v4097 = vpop.f32.mrb[0].mxu0
  %v4098 = vadd.f32 0.0, %v4097
  %v4099 = vpop.f32.mrb[0].mxu0
  %4100 = vmatprep.mubr.f32.mxu0 0.0
  %4101 = vmatmul.mubr.f32.gmra.mrb[0].mxu0 %v3798
  %v4102 = vpop.f32.mrb[0].mxu0
  %v4103 = vadd.f32 0.0, %v4102
  %v4104 = vpop.f32.mrb[0].mxu0
  %4105 = vmatprep.mubr.f32.mxu0 0.0
  %4106 = vmatmul.mubr.f32.gmra.mrb[0].mxu0 %v3801
  %v4107 = vpop.f32.mrb[0].mxu0
  %v4108 = vadd.f32 0.0, %v4107
  %v4109 = vpop.f32.mrb[0].mxu0
  %4110 = vmatprep.mubr.f32.mxu0 0.0
  %4111 = vmatmul.mubr.f32.gmra.mrb[0].mxu0 %v3804
  %v4112 = vpop.f32.mrb[0].mxu0
  %v4113 = vadd.f32 0.0, %v4112
  %v4114 = vpop.f32.mrb[0].mxu0
  %4115 = vmatprep.mubr.f32.mxu0 0.0
  %4116 = vmatmul.mubr.f32.gmra.mrb[0].mxu0 %v3807
  %v4117 = vpop.f32.mrb[0].mxu0
  %v4118 = vadd.f32 0.0, %v4117
  %v4119 = vpop.f32.mrb[0].mxu0
  %4120 = vmatprep.mubr.f32.mxu0 0.0
  %4121 = vmatmul.mubr.f32.gmra.mrb[0].mxu0 %v3810
  %v4122 = vpop.f32.mrb[0].mxu0
  %v4123 = vadd.f32 0.0, %v4122
  %v4124 = vpop.f32.mrb[0].mxu0
  %4125 = vmatprep.mubr.f32.mxu0 0.0
  %4126 = vmatmul.mubr.f32.gmra.mrb[0].mxu0 %v3813
  %v4127 = vpop.f32.mrb[0].mxu0
  %v4128 = vadd.f32 0.0, %v4127
  %v4129 = vpop.f32.mrb[0].mxu0
  %4130 = vmatprep.mubr.f32.mxu0 0.0
  %4131 = vmatmul.mubr.f32.gmra.mrb[0].mxu0 %v3816
  %v4132 = vpop.f32.mrb[0].mxu0
  %v4133 = vadd.f32 0.0, %v4132
  %v4134 = vpop.f32.mrb[0].mxu0
  %4135 = vmatprep.mubr.f32.mxu0 0.0
  %4136 = vmatmul.mubr.f32.gmra.mrb[0].mxu0 %v3819
  %v4137 = vpop.f32.mrb[0].mxu0
  %v4138 = vadd.f32 0.0, %v4137
  %v4139 = vpop.f32.mrb[0].mxu0
  %4140 = vmatprep.mubr.f32.mxu0 0.0
  %4141 = vmatmul.mubr.f32.gmra.mrb[0].mxu0 %v3822
  %v4142 = vpop.f32.mrb[0].mxu0
  %v4143 = vadd.f32 0.0, %v4142
  %v4144 = vpop.f32.mrb[0].mxu0
  %4145 = vmatprep.mubr.f32.mxu0 0.0
  %4146 = vmatmul.mubr.f32.gmra.mrb[0].mxu0 %v3825
  %v4147 = vpop.f32.mrb[0].mxu0
  %v4148 = vadd.f32 0.0, %v4147
  %v4149 = vpop.f32.mrb[0].mxu0
  %4150 = vmatprep.mubr.f32.mxu0 0.0
  %4151 = vmatmul.mubr.f32.gmra.mrb[0].mxu0 %v3828
  %v4152 = vpop.f32.mrb[0].mxu0
  %v4153 = vadd.f32 0.0, %v4152
  %v4154 = vpop.f32.mrb[0].mxu0
  %4155 = vmatprep.mubr.f32.mxu0 0.0
  %4156 = vmatmul.mubr.f32.gmra.mrb[0].mxu0 %v3831
  %v4157 = vpop.f32.mrb[0].mxu0
  %v4158 = vadd.f32 0.0, %v4157
  %v4159 = vpop.f32.mrb[0].mxu0
  %4160 = vmatprep.mubr.f32.mxu0 0.0
  %4161 = vmatmul.mubr.f32.gmra.mrb[0].mxu0 %v3834
  %v4162 = vpop.f32.mrb[0].mxu0
  %v4163 = vadd.f32 0.0, %v4162
  %v4164 = vpop.f32.mrb[0].mxu0
  %4165 = vmatprep.mubr.f32.mxu0 0.0
  %4166 = vmatmul.mubr.f32.gmra.mrb[0].mxu0 %v3837
  %v4167 = vpop.f32.mrb[0].mxu0
  %v4168 = vadd.f32 0.0, %v4167
  %v4169 = vpop.f32.mrb[0].mxu0
  %4170 = vmatprep.mubr.f32.mxu0 0.0
  %4171 = vmatmul.mubr.f32.gmra.mrb[0].mxu0 %v3840
  %v4172 = vpop.f32.mrb[0].mxu0
  %v4173 = vadd.f32 0.0, %v4172
  %v4174 = vpop.f32.mrb[0].mxu0
  %4175 = vmatprep.mubr.f32.mxu0 0.0
  %4176 = vmatmul.mubr.f32.gmra.mrb[0].mxu0 %v3843
  %v4177 = vpop.f32.mrb[0].mxu0
  %v4178 = vadd.f32 0.0, %v4177
  %v4179 = vpop.f32.mrb[0].mxu0
  %4180 = vmatprep.mubr.f32.mxu0 0.0
  %4181 = vmatmul.mubr.f32.gmra.mrb[0].mxu0 %v3846
  %v4182 = vpop.f32.mrb[0].mxu0
  %v4183 = vadd.f32 0.0, %v4182
  %v4184 = vpop.f32.mrb[0].mxu0
  %4185 = vmatprep.mubr.f32.mxu0 0.0
  %4186 = vmatmul.mubr.f32.gmra.mrb[0].mxu0 %v3849
  %v4187 = vpop.f32.mrb[0].mxu0
  %v4188 = vadd.f32 0.0, %v4187
  %v4189 = vpop.f32.mrb[0].mxu0
  %4190 = vmatprep.mubr.f32.mxu0 0.0
  %4191 = vmatmul.mubr.f32.gmra.mrb[0].mxu0 %v3852
  %v4192 = vpop.f32.mrb[0].mxu0
  %v4193 = vadd.f32 0.0, %v4192
  %v4194 = vpop.f32.mrb[0].mxu0
  %4195 = vmatprep.mubr.f32.mxu0 0.0
  %4196 = vmatmul.mubr.f32.gmra.mrb[0].mxu0 %v3855
  %v4197 = vpop.f32.mrb[0].mxu0
  %v4198 = vadd.f32 0.0, %v4197
  %v4199 = vpop.f32.mrb[0].mxu0
  %4200 = vmatprep.mubr.f32.mxu0 0.0
  %4201 = vmatmul.mubr.f32.gmra.mrb[0].mxu0 %v3858
  %v4202 = vpop.f32.mrb[0].mxu0
  %v4203 = vadd.f32 0.0, %v4202
  %v4204 = vpop.f32.mrb[0].mxu0
  %4205 = vmatprep.mubr.f32.mxu0 0.0
  %4206 = vmatmul.mubr.f32.gmra.mrb[0].mxu0 %v3861
  %v4207 = vpop.f32.mrb[0].mxu0
  %v4208 = vadd.f32 0.0, %v4207
  %v4209 = vpop.f32.mrb[0].mxu0
  %4210 = vmatprep.mubr.f32.mxu0 0.0
  %4211 = vmatmul.mubr.f32.gmra.mrb[0].mxu0 %v3864
  %v4212 = vpop.f32.mrb[0].mxu0
  %v4213 = vadd.f32 0.0, %v4212
  %v4214 = vpop.f32.mrb[0].mxu0
  %4215 = vmatprep.mubr.f32.mxu0 0.0
  %4216 = vmatmul.mubr.f32.gmra.mrb[0].mxu0 %v3867
  %v4217 = vpop.f32.mrb[0].mxu0
  %v4218 = vadd.f32 0.0, %v4217
  %v4219 = vpop.f32.mrb[0].mxu0
  %4220 = vmatprep.mubr.f32.mxu0 0.0
  %4221 = vmatmul.mubr.f32.gmra.mrb[0].mxu0 %v3870
  %v4222 = vpop.f32.mrb[0].mxu0
  %v4223 = vadd.f32 0.0, %v4222
  %v4224 = vpop.f32.mrb[0].mxu0
  %4225 = vmatprep.mubr.f32.mxu0 0.0
  %4226 = vmatmul.mubr.f32.gmra.mrb[0].mxu0 %v3873
  %v4227 = vpop.f32.mrb[0].mxu0
  %v4228 = vadd.f32 0.0, %v4227
  %v4229 = vpop.f32.mrb[0].mxu0
  %4230 = vmatprep.mubr.f32.mxu0 0.0
  %4231 = vmatmul.mubr.f32.gmra.mrb[0].mxu0 %v3876
  %v4232 = vpop.f32.mrb[0].mxu0
  %v4233 = vadd.f32 0.0, %v4232
  %v4234 = vpop.f32.mrb[0].mxu0
  %4235 = vmatprep.mubr.f32.mxu0 0.0
  %4236 = vmatmul.mubr.f32.gmra.mrb[0].mxu0 %v3879
  %v4237 = vpop.f32.mrb[0].mxu0
  %v4238 = vadd.f32 0.0, %v4237
  %v4239 = vpop.f32.mrb[0].mxu0
  %4240 = vmatprep.mubr.f32.mxu0 0.0
  %4241 = vmatmul.mubr.f32.gmra.mrb[0].mxu0 %v3882
  %v4242 = vpop.f32.mrb[0].mxu0
  %v4243 = vadd.f32 0.0, %v4242
  %v4244 = vpop.f32.mrb[0].mxu0
  %4245 = vmatprep.mubr.f32.mxu0 0.0
  %4246 = vmatmul.mubr.f32.gmra.mrb[0].mxu0 %v3885
  %v4247 = vpop.f32.mrb[0].mxu0
  %v4248 = vadd.f32 0.0, %v4247
  %v4249 = vpop.f32.mrb[0].mxu0
  %4250 = vmatprep.mubr.f32.mxu0 0.0
  %4251 = vmatmul.mubr.f32.gmra.mrb[0].mxu0 %v3888
  %v4252 = vpop.f32.mrb[0].mxu0
  %v4253 = vadd.f32 0.0, %v4252
  %v4254 = vpop.f32.mrb[0].mxu0
  %4255 = vmatprep.mubr.f32.mxu0 0.0
  %4256 = vmatmul.mubr.f32.gmra.mrb[0].mxu0 %v3891
  %v4257 = vpop.f32.mrb[0].mxu0
  %v4258 = vadd.f32 0.0, %v4257
  %v4259 = vpop.f32.mrb[0].mxu0
  %4260 = vmatprep.mubr.f32.mxu0 0.0
  %4261 = vmatmul.mubr.f32.gmra.mrb[0].mxu0 %v3894
  %v4262 = vpop.f32.mrb[0].mxu0
  %v4263 = vadd.f32 0.0, %v4262
  %v4264 = vpop.f32.mrb[0].mxu0
  %4265 = vmatprep.mubr.f32.mxu0 0.0
  %4266 = vmatmul.mubr.f32.gmra.mrb[0].mxu0 %v3897
  %v4267 = vpop.f32.mrb[0].mxu0
  %v4268 = vadd.f32 0.0, %v4267
  %v4269 = vpop.f32.mrb[0].mxu0
  %4270 = vmatprep.mubr.f32.mxu0 0.0
  %4271 = vmatmul.mubr.f32.gmra.mrb[0].mxu0 %v3900
  %v4272 = vpop.f32.mrb[0].mxu0
  %v4273 = vadd.f32 0.0, %v4272
  %v4274 = vpop.f32.mrb[0].mxu0
  %4275 = vmatprep.mubr.f32.mxu0 0.0
  %4276 = vmatmul.mubr.f32.gmra.mrb[0].mxu0 %v3903
  %v4277 = vpop.f32.mrb[0].mxu0
  %v4278 = vadd.f32 0.0, %v4277
  %v4279 = vpop.f32.mrb[0].mxu0
  %4280 = vmatprep.mubr.f32.mxu0 0.0
  %4281 = vmatmul.mubr.f32.gmra.mrb[0].mxu0 %v3906
  %v4282 = vpop.f32.mrb[0].mxu0
  %v4283 = vadd.f32 0.0, %v4282
  %v4284 = vpop.f32.mrb[0].mxu0
  %4285 = vmatprep.mubr.f32.mxu0 0.0
  %4286 = vmatmul.mubr.f32.gmra.mrb[0].mxu0 %v3909
  %v4287 = vpop.f32.mrb[0].mxu0
  %v4288 = vadd.f32 0.0, %v4287
  %v4289 = vpop.f32.mrb[0].mxu0
  %4290 = vmatprep.mubr.f32.mxu0 0.0
  %4291 = vmatmul.mubr.f32.gmra.mrb[0].mxu0 %v3912
  %v4292 = vpop.f32.mrb[0].mxu0
  %v4293 = vadd.f32 0.0, %v4292
  %v4294 = vpop.f32.mrb[0].mxu0
  %4295 = vmatprep.mubr.f32.mxu0 0.0
  %4296 = vmatmul.mubr.f32.gmra.mrb[0].mxu0 %v3915
  %v4297 = vpop.f32.mrb[0].mxu0
  %v4298 = vadd.f32 0.0, %v4297
  %v4299 = vpop.f32.mrb[0].mxu0
  %4300 = vmatprep.mubr.f32.mxu0 0.0
  %4301 = vmatmul.mubr.f32.gmra.mrb[0].mxu0 %v3918
  %v4302 = vpop.f32.mrb[0].mxu0
  %v4303 = vadd.f32 0.0, %v4302
  %v4304 = vpop.f32.mrb[0].mxu0
  %4305 = vmatprep.mubr.f32.mxu0 0.0
  %4306 = vmatmul.mubr.f32.gmra.mrb[0].mxu0 %v3921
  %v4307 = vpop.f32.mrb[0].mxu0
  %v4308 = vadd.f32 0.0, %v4307
  %v4309 = vpop.f32.mrb[0].mxu0
  %4310 = vdwg.mxu0
  %v4311 = vadd.f32 %v3601, %v3993
  %v4312 = vadd.f32 %v3602, %v3998
  %v4313 = vadd.f32 %v3603, %v4003
  %v4314 = vadd.f32 %v3604, %v4008
  %v4315 = vadd.f32 %v3605, %v4013
  %v4316 = vadd.f32 %v3606, %v4018
  %v4317 = vadd.f32 %v3607, %v4023
  %v4318 = vadd.f32 %v3608, %v4028
  %v4319 = vadd.f32 %v3609, %v4033
  %v4320 = vadd.f32 %v3610, %v4038
  %v4321 = vadd.f32 %v3611, %v4043
  %v4322 = vadd.f32 %v3612, %v4048
  %v4323 = vadd.f32 %v3613, %v4053
  %v4324 = vadd.f32 %v3614, %v4058
  %v4325 = vadd.f32 %v3615, %v4063
  %v4326 = vadd.f32 %v3616, %v4068
  %v4327 = vadd.f32 %v3617, %v4073
  %v4328 = vadd.f32 %v3618, %v4078
  %v4329 = vadd.f32 %v3619, %v4083
  %v4330 = vadd.f32 %v3620, %v4088
  %v4331 = vadd.f32 %v3621, %v4093
  %v4332 = vadd.f32 %v3622, %v4098
  %v4333 = vadd.f32 %v3623, %v4103
  %v4334 = vadd.f32 %v3624, %v4108
  %v4335 = vadd.f32 %v3625, %v4113
  %v4336 = vadd.f32 %v3626, %v4118
  %v4337 = vadd.f32 %v3627, %v4123
  %v4338 = vadd.f32 %v3628, %v4128
  %v4339 = vadd.f32 %v3629, %v4133
  %v4340 = vadd.f32 %v3630, %v4138
  %v4341 = vadd.f32 %v3631, %v4143
  %v4342 = vadd.f32 %v3632, %v4148
  %v4343 = vadd.f32 %v3633, %v4153
  %v4344 = vadd.f32 %v3634, %v4158
  %v4345 = vadd.f32 %v3635, %v4163
  %v4346 = vadd.f32 %v3636, %v4168
  %v4347 = vadd.f32 %v3637, %v4173
  %v4348 = vadd.f32 %v3638, %v4178
  %v4349 = vadd.f32 %v3639, %v4183
  %v4350 = vadd.f32 %v3640, %v4188
  %v4351 = vadd.f32 %v3641, %v4193
  %v4352 = vadd.f32 %v3642, %v4198
  %v4353 = vadd.f32 %v3643, %v4203
  %v4354 = vadd.f32 %v3644, %v4208
  %v4355 = vadd.f32 %v3645, %v4213
  %v4356 = vadd.f32 %v3646, %v4218
  %v4357 = vadd.f32 %v3647, %v4223
  %v4358 = vadd.f32 %v3648, %v4228
  %v4359 = vadd.f32 %v3649, %v4233
  %v4360 = vadd.f32 %v3650, %v4238
  %v4361 = vadd.f32 %v3651, %v4243
  %v4362 = vadd.f32 %v3652, %v4248
  %v4363 = vadd.f32 %v3653, %v4253
  %v4364 = vadd.f32 %v3654, %v4258
  %v4365 = vadd.f32 %v3655, %v4263
  %v4366 = vadd.f32 %v3656, %v4268
  %v4367 = vadd.f32 %v3657, %v4273
  %v4368 = vadd.f32 %v3658, %v4278
  %v4369 = vadd.f32 %v3659, %v4283
  %v4370 = vadd.f32 %v3660, %v4288
  %v4371 = vadd.f32 %v3661, %v4293
  %v4372 = vadd.f32 %v3662, %v4298
  %v4373 = vadd.f32 %v3663, %v4303
  %v4374 = vadd.f32 %v3664, %v4308
  %s4375 = scalar_lea.vmem [#allocation2], 48
  %v4376 = vld [vmem:[%s4375] sm:$0xff]
  %v4377 = vld [vmem:[%s4375 + $0x8] sm:$0xff]
  %v4378 = vld [vmem:[%s4375 + $0x18] sm:$0xff]
  %v4379 = vld [vmem:[%s4375 + $0x20] sm:$0xff]
  %v4380 = vld [vmem:[%s4375 + $0x30] sm:$0xff]
  %v4381 = vld [vmem:[%s4375 + $0x38] sm:$0xff]
  %v4382 = vld [vmem:[%s4375 + $0x48] sm:$0xff]
  %v4383 = vld [vmem:[%s4375 + $0x50] sm:$0xff]
  %v4384 = vld [vmem:[%s4375 + $0x60] sm:$0xff]
  %v4385 = vld [vmem:[%s4375 + $0x68] sm:$0xff]
  %v4386 = vld [vmem:[%s4375 + $0x78] sm:$0xff]
  %v4387 = vld [vmem:[%s4375 + $0x80] sm:$0xff]
  %v4388 = vld [vmem:[%s4375 + $0x90] sm:$0xff]
  %v4389 = vld [vmem:[%s4375 + $0x98] sm:$0xff]
  %v4390 = vld [vmem:[%s4375 + $0xa8] sm:$0xff]
  %v4391 = vld [vmem:[%s4375 + $0xb0] sm:$0xff]
  %v4392 = vld [vmem:[%s4375 + $0xc0] sm:$0xff]
  %v4393 = vld [vmem:[%s4375 + $0xc8] sm:$0xff]
  %v4394 = vld [vmem:[%s4375 + $0xd8] sm:$0xff]
  %v4395 = vld [vmem:[%s4375 + $0xe0] sm:$0xff]
  %v4396 = vld [vmem:[%s4375 + $0xf0] sm:$0xff]
  %v4397 = vld [vmem:[%s4375 + $0xf8] sm:$0xff]
  %v4398 = vld [vmem:[%s4375 + $0x108] sm:$0xff]
  %v4399 = vld [vmem:[%s4375 + $0x110] sm:$0xff]
  %v4400 = vld [vmem:[%s4375 + $0x120] sm:$0xff]
  %v4401 = vld [vmem:[%s4375 + $0x128] sm:$0xff]
  %v4402 = vld [vmem:[%s4375 + $0x138] sm:$0xff]
  %v4403 = vld [vmem:[%s4375 + $0x140] sm:$0xff]
  %v4404 = vld [vmem:[%s4375 + $0x150] sm:$0xff]
  %v4405 = vld [vmem:[%s4375 + $0x158] sm:$0xff]
  %v4406 = vld [vmem:[%s4375 + $0x168] sm:$0xff]
  %v4407 = vld [vmem:[%s4375 + $0x170] sm:$0xff]
  %v4408 = vld [vmem:[%s4375 + $0x1b0] sm:$0xff]
  %v4409 = vld [vmem:[%s4375 + $0x1b8] sm:$0xff]
  %v4410 = vld [vmem:[%s4375 + $0x1c8] sm:$0xff]
  %v4411 = vld [vmem:[%s4375 + $0x1d0] sm:$0xff]
  %v4412 = vld [vmem:[%s4375 + $0x1e0] sm:$0xff]
  %v4413 = vld [vmem:[%s4375 + $0x1e8] sm:$0xff]
  %v4414 = vld [vmem:[%s4375 + $0x1f8] sm:$0xff]
  %v4415 = vld [vmem:[%s4375 + $0x200] sm:$0xff]
  %v4416 = vld [vmem:[%s4375 + $0x210] sm:$0xff]
  %v4417 = vld [vmem:[%s4375 + $0x218] sm:$0xff]
  %v4418 = vld [vmem:[%s4375 + $0x228] sm:$0xff]
  %v4419 = vld [vmem:[%s4375 + $0x230] sm:$0xff]
  %v4420 = vld [vmem:[%s4375 + $0x240] sm:$0xff]
  %v4421 = vld [vmem:[%s4375 + $0x248] sm:$0xff]
  %v4422 = vld [vmem:[%s4375 + $0x258] sm:$0xff]
  %v4423 = vld [vmem:[%s4375 + $0x260] sm:$0xff]
  %v4424 = vld [vmem:[%s4375 + $0x270] sm:$0xff]
  %v4425 = vld [vmem:[%s4375 + $0x278] sm:$0xff]
  %v4426 = vld [vmem:[%s4375 + $0x288] sm:$0xff]
  %v4427 = vld [vmem:[%s4375 + $0x290] sm:$0xff]
  %v4428 = vld [vmem:[%s4375 + $0x2a0] sm:$0xff]
  %v4429 = vld [vmem:[%s4375 + $0x2a8] sm:$0xff]
  %v4430 = vld [vmem:[%s4375 + $0x2b8] sm:$0xff]
  %v4431 = vld [vmem:[%s4375 + $0x2c0] sm:$0xff]
  %v4432 = vld [vmem:[%s4375 + $0x2d0] sm:$0xff]
  %v4433 = vld [vmem:[%s4375 + $0x2d8] sm:$0xff]
  %v4434 = vld [vmem:[%s4375 + $0x2e8] sm:$0xff]
  %v4435 = vld [vmem:[%s4375 + $0x2f0] sm:$0xff]
  %v4436 = vld [vmem:[%s4375 + $0x300] sm:$0xff]
  %v4437 = vld [vmem:[%s4375 + $0x308] sm:$0xff]
  %v4438 = vld [vmem:[%s4375 + $0x318] sm:$0xff]
  %v4439 = vld [vmem:[%s4375 + $0x320] sm:$0xff]
  %s4440 = scalar_lea.vmem %s1, 24
  %v4441 = vld [vmem:[%s4440] sm:$0xf]
  %v4443 = vsel %vm26, %v4376, 0
  %v4446 = vsel %vm26, %v4377, 0
  %v4449 = vsel %vm26, %v4378, 0
  %v4452 = vsel %vm26, %v4379, 0
  %v4455 = vsel %vm26, %v4380, 0
  %v4458 = vsel %vm26, %v4381, 0
  %v4461 = vsel %vm26, %v4382, 0
  %v4464 = vsel %vm26, %v4383, 0
  %v4467 = vsel %vm26, %v4384, 0
  %v4470 = vsel %vm26, %v4385, 0
  %v4473 = vsel %vm26, %v4386, 0
  %v4476 = vsel %vm26, %v4387, 0
  %v4479 = vsel %vm26, %v4388, 0
  %v4482 = vsel %vm26, %v4389, 0
  %v4485 = vsel %vm26, %v4390, 0
  %v4488 = vsel %vm26, %v4391, 0
  %v4491 = vsel %vm26, %v4392, 0
  %v4494 = vsel %vm26, %v4393, 0
  %v4497 = vsel %vm26, %v4394, 0
  %v4500 = vsel %vm26, %v4395, 0
  %v4503 = vsel %vm26, %v4396, 0
  %v4506 = vsel %vm26, %v4397, 0
  %v4509 = vsel %vm26, %v4398, 0
  %v4512 = vsel %vm26, %v4399, 0
  %v4515 = vsel %vm26, %v4400, 0
  %v4518 = vsel %vm26, %v4401, 0
  %v4521 = vsel %vm26, %v4402, 0
  %v4524 = vsel %vm26, %v4403, 0
  %v4527 = vsel %vm26, %v4404, 0
  %v4530 = vsel %vm26, %v4405, 0
  %v4533 = vsel %vm26, %v4406, 0
  %v4536 = vsel %vm26, %v4407, 0
  %v4539 = vsel %vm26, %v4408, 0
  %v4542 = vsel %vm26, %v4409, 0
  %v4545 = vsel %vm26, %v4410, 0
  %v4548 = vsel %vm26, %v4411, 0
  %v4551 = vsel %vm26, %v4412, 0
  %v4554 = vsel %vm26, %v4413, 0
  %v4557 = vsel %vm26, %v4414, 0
  %v4560 = vsel %vm26, %v4415, 0
  %v4563 = vsel %vm26, %v4416, 0
  %v4566 = vsel %vm26, %v4417, 0
  %v4569 = vsel %vm26, %v4418, 0
  %v4572 = vsel %vm26, %v4419, 0
  %v4575 = vsel %vm26, %v4420, 0
  %v4578 = vsel %vm26, %v4421, 0
  %v4581 = vsel %vm26, %v4422, 0
  %v4584 = vsel %vm26, %v4423, 0
  %v4587 = vsel %vm26, %v4424, 0
  %v4590 = vsel %vm26, %v4425, 0
  %v4593 = vsel %vm26, %v4426, 0
  %v4596 = vsel %vm26, %v4427, 0
  %v4599 = vsel %vm26, %v4428, 0
  %v4602 = vsel %vm26, %v4429, 0
  %v4605 = vsel %vm26, %v4430, 0
  %v4608 = vsel %vm26, %v4431, 0
  %v4611 = vsel %vm26, %v4432, 0
  %v4614 = vsel %vm26, %v4433, 0
  %v4617 = vsel %vm26, %v4434, 0
  %v4620 = vsel %vm26, %v4435, 0
  %v4623 = vsel %vm26, %v4436, 0
  %v4626 = vsel %vm26, %v4437, 0
  %v4629 = vsel %vm26, %v4438, 0
  %v4632 = vsel %vm26, %v4439, 0
  %v4635 = vsel %vm566, %v4441, 0
  %4637 = vmatprep.subr.mxu0 0.0
  %4638 = vmatpush1.msra.mxu0 %v4635
  %4639 = vmatprep.subr.mxu0 0.0
  %4640 = vmatpush1.msra.mxu0 0.0
  %4641 = vmatprep.subr.mxu0 0.0
  %4642 = vmatpush1.msra.mxu0 0.0
  %4643 = vmatprep.subr.mxu0 0.0
  %4644 = vmatpush1.msra.mxu0 0.0
  %4645 = vmatprep.subr.mxu0 0.0
  %4646 = vmatpush1.msra.mxu0 0.0
  %4647 = vmatprep.subr.mxu0 0.0
  %4648 = vmatpush1.msra.mxu0 0.0
  %4649 = vmatprep.subr.mxu0 0.0
  %4650 = vmatpush1.msra.mxu0 0.0
  %4651 = vmatprep.subr.mxu0 0.0
  %4652 = vmatpush1.msra.mxu0 0.0
  %4653 = vmatprep.subr.mxu0 0.0
  %4654 = vmatpush1.msra.mxu0 0.0
  %4655 = vmatprep.subr.mxu0 0.0
  %4656 = vmatpush1.msra.mxu0 0.0
  %4657 = vmatprep.subr.mxu0 0.0
  %4658 = vmatpush1.msra.mxu0 0.0
  %4659 = vmatprep.subr.mxu0 0.0
  %4660 = vmatpush1.msra.mxu0 0.0
  %4661 = vmatprep.subr.mxu0 0.0
  %4662 = vmatpush1.msra.mxu0 0.0
  %4663 = vmatprep.subr.mxu0 0.0
  %4664 = vmatpush1.msra.mxu0 0.0
  %4665 = vmatprep.subr.mxu0 0.0
  %4666 = vmatpush1.msra.mxu0 0.0
  %4667 = vmatprep.subr.mxu0 0.0
  %4668 = vmatpush1.msra.mxu0 0.0
  %4669 = vmatprep.subr.mxu0 0.0
  %4670 = vmatpush1.msra.mxu0 0.0
  %4671 = vmatprep.subr.mxu0 0.0
  %4672 = vmatpush1.msra.mxu0 0.0
  %4673 = vmatprep.subr.mxu0 0.0
  %4674 = vmatpush1.msra.mxu0 0.0
  %4675 = vmatprep.subr.mxu0 0.0
  %4676 = vmatpush1.msra.mxu0 0.0
  %4677 = vmatprep.subr.mxu0 0.0
  %4678 = vmatpush1.msra.mxu0 0.0
  %4679 = vmatprep.subr.mxu0 0.0
  %4680 = vmatpush1.msra.mxu0 0.0
  %4681 = vmatprep.subr.mxu0 0.0
  %4682 = vmatpush1.msra.mxu0 0.0
  %4683 = vmatprep.subr.mxu0 0.0
  %4684 = vmatpush1.msra.mxu0 0.0
  %4685 = vmatprep.subr.mxu0 0.0
  %4686 = vmatpush1.msra.mxu0 0.0
  %4687 = vmatprep.subr.mxu0 0.0
  %4688 = vmatpush1.msra.mxu0 0.0
  %4689 = vmatprep.subr.mxu0 0.0
  %4690 = vmatpush1.msra.mxu0 0.0
  %4691 = vmatprep.subr.mxu0 0.0
  %4692 = vmatpush1.msra.mxu0 0.0
  %4693 = vmatprep.subr.mxu0 0.0
  %4694 = vmatpush1.msra.mxu0 0.0
  %4695 = vmatprep.subr.mxu0 0.0
  %4696 = vmatpush1.msra.mxu0 0.0
  %4697 = vmatprep.subr.mxu0 0.0
  %4698 = vmatpush1.msra.mxu0 0.0
  %4699 = vmatprep.subr.mxu0 0.0
  %4700 = vmatpush1.msra.mxu0 0.0
  %4701 = vmatprep.mubr.f32.mxu0 0.0
  %4702 = vmatmul.mubr.f32.gmra.mrb[0].mxu0 %v4443
  %v4703 = vpop.f32.mrb[0].mxu0
  %v4704 = vadd.f32 0.0, %v4703
  %v4705 = vpop.f32.mrb[0].mxu0
  %4706 = vmatprep.mubr.f32.mxu0 0.0
  %4707 = vmatmul.mubr.f32.gmra.mrb[0].mxu0 %v4446
  %v4708 = vpop.f32.mrb[0].mxu0
  %v4709 = vadd.f32 0.0, %v4708
  %v4710 = vpop.f32.mrb[0].mxu0
  %4711 = vmatprep.mubr.f32.mxu0 0.0
  %4712 = vmatmul.mubr.f32.gmra.mrb[0].mxu0 %v4449
  %v4713 = vpop.f32.mrb[0].mxu0
  %v4714 = vadd.f32 0.0, %v4713
  %v4715 = vpop.f32.mrb[0].mxu0
  %4716 = vmatprep.mubr.f32.mxu0 0.0
  %4717 = vmatmul.mubr.f32.gmra.mrb[0].mxu0 %v4452
  %v4718 = vpop.f32.mrb[0].mxu0
  %v4719 = vadd.f32 0.0, %v4718
  %v4720 = vpop.f32.mrb[0].mxu0
  %4721 = vmatprep.mubr.f32.mxu0 0.0
  %4722 = vmatmul.mubr.f32.gmra.mrb[0].mxu0 %v4455
  %v4723 = vpop.f32.mrb[0].mxu0
  %v4724 = vadd.f32 0.0, %v4723
  %v4725 = vpop.f32.mrb[0].mxu0
  %4726 = vmatprep.mubr.f32.mxu0 0.0
  %4727 = vmatmul.mubr.f32.gmra.mrb[0].mxu0 %v4458
  %v4728 = vpop.f32.mrb[0].mxu0
  %v4729 = vadd.f32 0.0, %v4728
  %v4730 = vpop.f32.mrb[0].mxu0
  %4731 = vmatprep.mubr.f32.mxu0 0.0
  %4732 = vmatmul.mubr.f32.gmra.mrb[0].mxu0 %v4461
  %v4733 = vpop.f32.mrb[0].mxu0
  %v4734 = vadd.f32 0.0, %v4733
  %v4735 = vpop.f32.mrb[0].mxu0
  %4736 = vmatprep.mubr.f32.mxu0 0.0
  %4737 = vmatmul.mubr.f32.gmra.mrb[0].mxu0 %v4464
  %v4738 = vpop.f32.mrb[0].mxu0
  %v4739 = vadd.f32 0.0, %v4738
  %v4740 = vpop.f32.mrb[0].mxu0
  %4741 = vmatprep.mubr.f32.mxu0 0.0
  %4742 = vmatmul.mubr.f32.gmra.mrb[0].mxu0 %v4467
  %v4743 = vpop.f32.mrb[0].mxu0
  %v4744 = vadd.f32 0.0, %v4743
  %v4745 = vpop.f32.mrb[0].mxu0
  %4746 = vmatprep.mubr.f32.mxu0 0.0
  %4747 = vmatmul.mubr.f32.gmra.mrb[0].mxu0 %v4470
  %v4748 = vpop.f32.mrb[0].mxu0
  %v4749 = vadd.f32 0.0, %v4748
  %v4750 = vpop.f32.mrb[0].mxu0
  %4751 = vmatprep.mubr.f32.mxu0 0.0
  %4752 = vmatmul.mubr.f32.gmra.mrb[0].mxu0 %v4473
  %v4753 = vpop.f32.mrb[0].mxu0
  %v4754 = vadd.f32 0.0, %v4753
  %v4755 = vpop.f32.mrb[0].mxu0
  %4756 = vmatprep.mubr.f32.mxu0 0.0
  %4757 = vmatmul.mubr.f32.gmra.mrb[0].mxu0 %v4476
  %v4758 = vpop.f32.mrb[0].mxu0
  %v4759 = vadd.f32 0.0, %v4758
  %v4760 = vpop.f32.mrb[0].mxu0
  %4761 = vmatprep.mubr.f32.mxu0 0.0
  %4762 = vmatmul.mubr.f32.gmra.mrb[0].mxu0 %v4479
  %v4763 = vpop.f32.mrb[0].mxu0
  %v4764 = vadd.f32 0.0, %v4763
  %v4765 = vpop.f32.mrb[0].mxu0
  %4766 = vmatprep.mubr.f32.mxu0 0.0
  %4767 = vmatmul.mubr.f32.gmra.mrb[0].mxu0 %v4482
  %v4768 = vpop.f32.mrb[0].mxu0
  %v4769 = vadd.f32 0.0, %v4768
  %v4770 = vpop.f32.mrb[0].mxu0
  %4771 = vmatprep.mubr.f32.mxu0 0.0
  %4772 = vmatmul.mubr.f32.gmra.mrb[0].mxu0 %v4485
  %v4773 = vpop.f32.mrb[0].mxu0
  %v4774 = vadd.f32 0.0, %v4773
  %v4775 = vpop.f32.mrb[0].mxu0
  %4776 = vmatprep.mubr.f32.mxu0 0.0
  %4777 = vmatmul.mubr.f32.gmra.mrb[0].mxu0 %v4488
  %v4778 = vpop.f32.mrb[0].mxu0
  %v4779 = vadd.f32 0.0, %v4778
  %v4780 = vpop.f32.mrb[0].mxu0
  %4781 = vmatprep.mubr.f32.mxu0 0.0
  %4782 = vmatmul.mubr.f32.gmra.mrb[0].mxu0 %v4491
  %v4783 = vpop.f32.mrb[0].mxu0
  %v4784 = vadd.f32 0.0, %v4783
  %v4785 = vpop.f32.mrb[0].mxu0
  %4786 = vmatprep.mubr.f32.mxu0 0.0
  %4787 = vmatmul.mubr.f32.gmra.mrb[0].mxu0 %v4494
  %v4788 = vpop.f32.mrb[0].mxu0
  %v4789 = vadd.f32 0.0, %v4788
  %v4790 = vpop.f32.mrb[0].mxu0
  %4791 = vmatprep.mubr.f32.mxu0 0.0
  %4792 = vmatmul.mubr.f32.gmra.mrb[0].mxu0 %v4497
  %v4793 = vpop.f32.mrb[0].mxu0
  %v4794 = vadd.f32 0.0, %v4793
  %v4795 = vpop.f32.mrb[0].mxu0
  %4796 = vmatprep.mubr.f32.mxu0 0.0
  %4797 = vmatmul.mubr.f32.gmra.mrb[0].mxu0 %v4500
  %v4798 = vpop.f32.mrb[0].mxu0
  %v4799 = vadd.f32 0.0, %v4798
  %v4800 = vpop.f32.mrb[0].mxu0
  %4801 = vmatprep.mubr.f32.mxu0 0.0
  %4802 = vmatmul.mubr.f32.gmra.mrb[0].mxu0 %v4503
  %v4803 = vpop.f32.mrb[0].mxu0
  %v4804 = vadd.f32 0.0, %v4803
  %v4805 = vpop.f32.mrb[0].mxu0
  %4806 = vmatprep.mubr.f32.mxu0 0.0
  %4807 = vmatmul.mubr.f32.gmra.mrb[0].mxu0 %v4506
  %v4808 = vpop.f32.mrb[0].mxu0
  %v4809 = vadd.f32 0.0, %v4808
  %v4810 = vpop.f32.mrb[0].mxu0
  %4811 = vmatprep.mubr.f32.mxu0 0.0
  %4812 = vmatmul.mubr.f32.gmra.mrb[0].mxu0 %v4509
  %v4813 = vpop.f32.mrb[0].mxu0
  %v4814 = vadd.f32 0.0, %v4813
  %v4815 = vpop.f32.mrb[0].mxu0
  %4816 = vmatprep.mubr.f32.mxu0 0.0
  %4817 = vmatmul.mubr.f32.gmra.mrb[0].mxu0 %v4512
  %v4818 = vpop.f32.mrb[0].mxu0
  %v4819 = vadd.f32 0.0, %v4818
  %v4820 = vpop.f32.mrb[0].mxu0
  %4821 = vmatprep.mubr.f32.mxu0 0.0
  %4822 = vmatmul.mubr.f32.gmra.mrb[0].mxu0 %v4515
  %v4823 = vpop.f32.mrb[0].mxu0
  %v4824 = vadd.f32 0.0, %v4823
  %v4825 = vpop.f32.mrb[0].mxu0
  %4826 = vmatprep.mubr.f32.mxu0 0.0
  %4827 = vmatmul.mubr.f32.gmra.mrb[0].mxu0 %v4518
  %v4828 = vpop.f32.mrb[0].mxu0
  %v4829 = vadd.f32 0.0, %v4828
  %v4830 = vpop.f32.mrb[0].mxu0
  %4831 = vmatprep.mubr.f32.mxu0 0.0
  %4832 = vmatmul.mubr.f32.gmra.mrb[0].mxu0 %v4521
  %v4833 = vpop.f32.mrb[0].mxu0
  %v4834 = vadd.f32 0.0, %v4833
  %v4835 = vpop.f32.mrb[0].mxu0
  %4836 = vmatprep.mubr.f32.mxu0 0.0
  %4837 = vmatmul.mubr.f32.gmra.mrb[0].mxu0 %v4524
  %v4838 = vpop.f32.mrb[0].mxu0
  %v4839 = vadd.f32 0.0, %v4838
  %v4840 = vpop.f32.mrb[0].mxu0
  %4841 = vmatprep.mubr.f32.mxu0 0.0
  %4842 = vmatmul.mubr.f32.gmra.mrb[0].mxu0 %v4527
  %v4843 = vpop.f32.mrb[0].mxu0
  %v4844 = vadd.f32 0.0, %v4843
  %v4845 = vpop.f32.mrb[0].mxu0
  %4846 = vmatprep.mubr.f32.mxu0 0.0
  %4847 = vmatmul.mubr.f32.gmra.mrb[0].mxu0 %v4530
  %v4848 = vpop.f32.mrb[0].mxu0
  %v4849 = vadd.f32 0.0, %v4848
  %v4850 = vpop.f32.mrb[0].mxu0
  %4851 = vmatprep.mubr.f32.mxu0 0.0
  %4852 = vmatmul.mubr.f32.gmra.mrb[0].mxu0 %v4533
  %v4853 = vpop.f32.mrb[0].mxu0
  %v4854 = vadd.f32 0.0, %v4853
  %v4855 = vpop.f32.mrb[0].mxu0
  %4856 = vmatprep.mubr.f32.mxu0 0.0
  %4857 = vmatmul.mubr.f32.gmra.mrb[0].mxu0 %v4536
  %v4858 = vpop.f32.mrb[0].mxu0
  %v4859 = vadd.f32 0.0, %v4858
  %v4860 = vpop.f32.mrb[0].mxu0
  %4861 = vmatprep.mubr.f32.mxu0 0.0
  %4862 = vmatmul.mubr.f32.gmra.mrb[0].mxu0 %v4539
  %v4863 = vpop.f32.mrb[0].mxu0
  %v4864 = vadd.f32 0.0, %v4863
  %v4865 = vpop.f32.mrb[0].mxu0
  %4866 = vmatprep.mubr.f32.mxu0 0.0
  %4867 = vmatmul.mubr.f32.gmra.mrb[0].mxu0 %v4542
  %v4868 = vpop.f32.mrb[0].mxu0
  %v4869 = vadd.f32 0.0, %v4868
  %v4870 = vpop.f32.mrb[0].mxu0
  %4871 = vmatprep.mubr.f32.mxu0 0.0
  %4872 = vmatmul.mubr.f32.gmra.mrb[0].mxu0 %v4545
  %v4873 = vpop.f32.mrb[0].mxu0
  %v4874 = vadd.f32 0.0, %v4873
  %v4875 = vpop.f32.mrb[0].mxu0
  %4876 = vmatprep.mubr.f32.mxu0 0.0
  %4877 = vmatmul.mubr.f32.gmra.mrb[0].mxu0 %v4548
  %v4878 = vpop.f32.mrb[0].mxu0
  %v4879 = vadd.f32 0.0, %v4878
  %v4880 = vpop.f32.mrb[0].mxu0
  %4881 = vmatprep.mubr.f32.mxu0 0.0
  %4882 = vmatmul.mubr.f32.gmra.mrb[0].mxu0 %v4551
  %v4883 = vpop.f32.mrb[0].mxu0
  %v4884 = vadd.f32 0.0, %v4883
  %v4885 = vpop.f32.mrb[0].mxu0
  %4886 = vmatprep.mubr.f32.mxu0 0.0
  %4887 = vmatmul.mubr.f32.gmra.mrb[0].mxu0 %v4554
  %v4888 = vpop.f32.mrb[0].mxu0
  %v4889 = vadd.f32 0.0, %v4888
  %v4890 = vpop.f32.mrb[0].mxu0
  %4891 = vmatprep.mubr.f32.mxu0 0.0
  %4892 = vmatmul.mubr.f32.gmra.mrb[0].mxu0 %v4557
  %v4893 = vpop.f32.mrb[0].mxu0
  %v4894 = vadd.f32 0.0, %v4893
  %v4895 = vpop.f32.mrb[0].mxu0
  %4896 = vmatprep.mubr.f32.mxu0 0.0
  %4897 = vmatmul.mubr.f32.gmra.mrb[0].mxu0 %v4560
  %v4898 = vpop.f32.mrb[0].mxu0
  %v4899 = vadd.f32 0.0, %v4898
  %v4900 = vpop.f32.mrb[0].mxu0
  %4901 = vmatprep.mubr.f32.mxu0 0.0
  %4902 = vmatmul.mubr.f32.gmra.mrb[0].mxu0 %v4563
  %v4903 = vpop.f32.mrb[0].mxu0
  %v4904 = vadd.f32 0.0, %v4903
  %v4905 = vpop.f32.mrb[0].mxu0
  %4906 = vmatprep.mubr.f32.mxu0 0.0
  %4907 = vmatmul.mubr.f32.gmra.mrb[0].mxu0 %v4566
  %v4908 = vpop.f32.mrb[0].mxu0
  %v4909 = vadd.f32 0.0, %v4908
  %v4910 = vpop.f32.mrb[0].mxu0
  %4911 = vmatprep.mubr.f32.mxu0 0.0
  %4912 = vmatmul.mubr.f32.gmra.mrb[0].mxu0 %v4569
  %v4913 = vpop.f32.mrb[0].mxu0
  %v4914 = vadd.f32 0.0, %v4913
  %v4915 = vpop.f32.mrb[0].mxu0
  %4916 = vmatprep.mubr.f32.mxu0 0.0
  %4917 = vmatmul.mubr.f32.gmra.mrb[0].mxu0 %v4572
  %v4918 = vpop.f32.mrb[0].mxu0
  %v4919 = vadd.f32 0.0, %v4918
  %v4920 = vpop.f32.mrb[0].mxu0
  %4921 = vmatprep.mubr.f32.mxu0 0.0
  %4922 = vmatmul.mubr.f32.gmra.mrb[0].mxu0 %v4575
  %v4923 = vpop.f32.mrb[0].mxu0
  %v4924 = vadd.f32 0.0, %v4923
  %v4925 = vpop.f32.mrb[0].mxu0
  %4926 = vmatprep.mubr.f32.mxu0 0.0
  %4927 = vmatmul.mubr.f32.gmra.mrb[0].mxu0 %v4578
  %v4928 = vpop.f32.mrb[0].mxu0
  %v4929 = vadd.f32 0.0, %v4928
  %v4930 = vpop.f32.mrb[0].mxu0
  %4931 = vmatprep.mubr.f32.mxu0 0.0
  %4932 = vmatmul.mubr.f32.gmra.mrb[0].mxu0 %v4581
  %v4933 = vpop.f32.mrb[0].mxu0
  %v4934 = vadd.f32 0.0, %v4933
  %v4935 = vpop.f32.mrb[0].mxu0
  %4936 = vmatprep.mubr.f32.mxu0 0.0
  %4937 = vmatmul.mubr.f32.gmra.mrb[0].mxu0 %v4584
  %v4938 = vpop.f32.mrb[0].mxu0
  %v4939 = vadd.f32 0.0, %v4938
  %v4940 = vpop.f32.mrb[0].mxu0
  %4941 = vmatprep.mubr.f32.mxu0 0.0
  %4942 = vmatmul.mubr.f32.gmra.mrb[0].mxu0 %v4587
  %v4943 = vpop.f32.mrb[0].mxu0
  %v4944 = vadd.f32 0.0, %v4943
  %v4945 = vpop.f32.mrb[0].mxu0
  %4946 = vmatprep.mubr.f32.mxu0 0.0
  %4947 = vmatmul.mubr.f32.gmra.mrb[0].mxu0 %v4590
  %v4948 = vpop.f32.mrb[0].mxu0
  %v4949 = vadd.f32 0.0, %v4948
  %v4950 = vpop.f32.mrb[0].mxu0
  %4951 = vmatprep.mubr.f32.mxu0 0.0
  %4952 = vmatmul.mubr.f32.gmra.mrb[0].mxu0 %v4593
  %v4953 = vpop.f32.mrb[0].mxu0
  %v4954 = vadd.f32 0.0, %v4953
  %v4955 = vpop.f32.mrb[0].mxu0
  %4956 = vmatprep.mubr.f32.mxu0 0.0
  %4957 = vmatmul.mubr.f32.gmra.mrb[0].mxu0 %v4596
  %v4958 = vpop.f32.mrb[0].mxu0
  %v4959 = vadd.f32 0.0, %v4958
  %v4960 = vpop.f32.mrb[0].mxu0
  %4961 = vmatprep.mubr.f32.mxu0 0.0
  %4962 = vmatmul.mubr.f32.gmra.mrb[0].mxu0 %v4599
  %v4963 = vpop.f32.mrb[0].mxu0
  %v4964 = vadd.f32 0.0, %v4963
  %v4965 = vpop.f32.mrb[0].mxu0
  %4966 = vmatprep.mubr.f32.mxu0 0.0
  %4967 = vmatmul.mubr.f32.gmra.mrb[0].mxu0 %v4602
  %v4968 = vpop.f32.mrb[0].mxu0
  %v4969 = vadd.f32 0.0, %v4968
  %v4970 = vpop.f32.mrb[0].mxu0
  %4971 = vmatprep.mubr.f32.mxu0 0.0
  %4972 = vmatmul.mubr.f32.gmra.mrb[0].mxu0 %v4605
  %v4973 = vpop.f32.mrb[0].mxu0
  %v4974 = vadd.f32 0.0, %v4973
  %v4975 = vpop.f32.mrb[0].mxu0
  %4976 = vmatprep.mubr.f32.mxu0 0.0
  %4977 = vmatmul.mubr.f32.gmra.mrb[0].mxu0 %v4608
  %v4978 = vpop.f32.mrb[0].mxu0
  %v4979 = vadd.f32 0.0, %v4978
  %v4980 = vpop.f32.mrb[0].mxu0
  %4981 = vmatprep.mubr.f32.mxu0 0.0
  %4982 = vmatmul.mubr.f32.gmra.mrb[0].mxu0 %v4611
  %v4983 = vpop.f32.mrb[0].mxu0
  %v4984 = vadd.f32 0.0, %v4983
  %v4985 = vpop.f32.mrb[0].mxu0
  %4986 = vmatprep.mubr.f32.mxu0 0.0
  %4987 = vmatmul.mubr.f32.gmra.mrb[0].mxu0 %v4614
  %v4988 = vpop.f32.mrb[0].mxu0
  %v4989 = vadd.f32 0.0, %v4988
  %v4990 = vpop.f32.mrb[0].mxu0
  %4991 = vmatprep.mubr.f32.mxu0 0.0
  %4992 = vmatmul.mubr.f32.gmra.mrb[0].mxu0 %v4617
  %v4993 = vpop.f32.mrb[0].mxu0
  %v4994 = vadd.f32 0.0, %v4993
  %v4995 = vpop.f32.mrb[0].mxu0
  %4996 = vmatprep.mubr.f32.mxu0 0.0
  %4997 = vmatmul.mubr.f32.gmra.mrb[0].mxu0 %v4620
  %v4998 = vpop.f32.mrb[0].mxu0
  %v4999 = vadd.f32 0.0, %v4998
  %v5000 = vpop.f32.mrb[0].mxu0
  %5001 = vmatprep.mubr.f32.mxu0 0.0
  %5002 = vmatmul.mubr.f32.gmra.mrb[0].mxu0 %v4623
  %v5003 = vpop.f32.mrb[0].mxu0
  %v5004 = vadd.f32 0.0, %v5003
  %v5005 = vpop.f32.mrb[0].mxu0
  %5006 = vmatprep.mubr.f32.mxu0 0.0
  %5007 = vmatmul.mubr.f32.gmra.mrb[0].mxu0 %v4626
  %v5008 = vpop.f32.mrb[0].mxu0
  %v5009 = vadd.f32 0.0, %v5008
  %v5010 = vpop.f32.mrb[0].mxu0
  %5011 = vmatprep.mubr.f32.mxu0 0.0
  %5012 = vmatmul.mubr.f32.gmra.mrb[0].mxu0 %v4629
  %v5013 = vpop.f32.mrb[0].mxu0
  %v5014 = vadd.f32 0.0, %v5013
  %v5015 = vpop.f32.mrb[0].mxu0
  %5016 = vmatprep.mubr.f32.mxu0 0.0
  %5017 = vmatmul.mubr.f32.gmra.mrb[0].mxu0 %v4632
  %v5018 = vpop.f32.mrb[0].mxu0
  %v5019 = vadd.f32 0.0, %v5018
  %v5020 = vpop.f32.mrb[0].mxu0
  %5021 = vdwg.mxu0
  %v5022 = vadd.f32 %v4311, %v4704
  %v5023 = vadd.f32 %v4312, %v4709
  %v5024 = vadd.f32 %v4313, %v4714
  %v5025 = vadd.f32 %v4314, %v4719
  %v5026 = vadd.f32 %v4315, %v4724
  %v5027 = vadd.f32 %v4316, %v4729
  %v5028 = vadd.f32 %v4317, %v4734
  %v5029 = vadd.f32 %v4318, %v4739
  %v5030 = vadd.f32 %v4319, %v4744
  %v5031 = vadd.f32 %v4320, %v4749
  %v5032 = vadd.f32 %v4321, %v4754
  %v5033 = vadd.f32 %v4322, %v4759
  %v5034 = vadd.f32 %v4323, %v4764
  %v5035 = vadd.f32 %v4324, %v4769
  %v5036 = vadd.f32 %v4325, %v4774
  %v5037 = vadd.f32 %v4326, %v4779
  %v5038 = vadd.f32 %v4327, %v4784
  %v5039 = vadd.f32 %v4328, %v4789
  %v5040 = vadd.f32 %v4329, %v4794
  %v5041 = vadd.f32 %v4330, %v4799
  %v5042 = vadd.f32 %v4331, %v4804
  %v5043 = vadd.f32 %v4332, %v4809
  %v5044 = vadd.f32 %v4333, %v4814
  %v5045 = vadd.f32 %v4334, %v4819
  %v5046 = vadd.f32 %v4335, %v4824
  %v5047 = vadd.f32 %v4336, %v4829
  %v5048 = vadd.f32 %v4337, %v4834
  %v5049 = vadd.f32 %v4338, %v4839
  %v5050 = vadd.f32 %v4339, %v4844
  %v5051 = vadd.f32 %v4340, %v4849
  %v5052 = vadd.f32 %v4341, %v4854
  %v5053 = vadd.f32 %v4342, %v4859
  %v5054 = vadd.f32 %v4343, %v4864
  %v5055 = vadd.f32 %v4344, %v4869
  %v5056 = vadd.f32 %v4345, %v4874
  %v5057 = vadd.f32 %v4346, %v4879
  %v5058 = vadd.f32 %v4347, %v4884
  %v5059 = vadd.f32 %v4348, %v4889
  %v5060 = vadd.f32 %v4349, %v4894
  %v5061 = vadd.f32 %v4350, %v4899
  %v5062 = vadd.f32 %v4351, %v4904
  %v5063 = vadd.f32 %v4352, %v4909
  %v5064 = vadd.f32 %v4353, %v4914
  %v5065 = vadd.f32 %v4354, %v4919
  %v5066 = vadd.f32 %v4355, %v4924
  %v5067 = vadd.f32 %v4356, %v4929
  %v5068 = vadd.f32 %v4357, %v4934
  %v5069 = vadd.f32 %v4358, %v4939
  %v5070 = vadd.f32 %v4359, %v4944
  %v5071 = vadd.f32 %v4360, %v4949
  %v5072 = vadd.f32 %v4361, %v4954
  %v5073 = vadd.f32 %v4362, %v4959
  %v5074 = vadd.f32 %v4363, %v4964
  %v5075 = vadd.f32 %v4364, %v4969
  %v5076 = vadd.f32 %v4365, %v4974
  %v5077 = vadd.f32 %v4366, %v4979
  %v5078 = vadd.f32 %v4367, %v4984
  %v5079 = vadd.f32 %v4368, %v4989
  %v5080 = vadd.f32 %v4369, %v4994
  %v5081 = vadd.f32 %v4370, %v4999
  %v5082 = vadd.f32 %v4371, %v5004
  %v5083 = vadd.f32 %v4372, %v5009
  %v5084 = vadd.f32 %v4373, %v5014
  %v5085 = vadd.f32 %v4374, %v5019
  %v5086 = vld [vmem:[%s4375 + $0x1] sm:$0xff]
  %v5087 = vld [vmem:[%s4375 + $0x9] sm:$0xff]
  %v5088 = vld [vmem:[%s4375 + $0x19] sm:$0xff]
  %v5089 = vld [vmem:[%s4375 + $0x21] sm:$0xff]
  %v5090 = vld [vmem:[%s4375 + $0x31] sm:$0xff]
  %v5091 = vld [vmem:[%s4375 + $0x39] sm:$0xff]
  %v5092 = vld [vmem:[%s4375 + $0x49] sm:$0xff]
  %v5093 = vld [vmem:[%s4375 + $0x51] sm:$0xff]
  %v5094 = vld [vmem:[%s4375 + $0x61] sm:$0xff]
  %v5095 = vld [vmem:[%s4375 + $0x69] sm:$0xff]
  %v5096 = vld [vmem:[%s4375 + $0x79] sm:$0xff]
  %v5097 = vld [vmem:[%s4375 + $0x81] sm:$0xff]
  %v5098 = vld [vmem:[%s4375 + $0x91] sm:$0xff]
  %v5099 = vld [vmem:[%s4375 + $0x99] sm:$0xff]
  %v5100 = vld [vmem:[%s4375 + $0xa9] sm:$0xff]
  %v5101 = vld [vmem:[%s4375 + $0xb1] sm:$0xff]
  %v5102 = vld [vmem:[%s4375 + $0xc1] sm:$0xff]
  %v5103 = vld [vmem:[%s4375 + $0xc9] sm:$0xff]
  %v5104 = vld [vmem:[%s4375 + $0xd9] sm:$0xff]
  %v5105 = vld [vmem:[%s4375 + $0xe1] sm:$0xff]
  %v5106 = vld [vmem:[%s4375 + $0xf1] sm:$0xff]
  %v5107 = vld [vmem:[%s4375 + $0xf9] sm:$0xff]
  %v5108 = vld [vmem:[%s4375 + $0x109] sm:$0xff]
  %v5109 = vld [vmem:[%s4375 + $0x111] sm:$0xff]
  %v5110 = vld [vmem:[%s4375 + $0x121] sm:$0xff]
  %v5111 = vld [vmem:[%s4375 + $0x129] sm:$0xff]
  %v5112 = vld [vmem:[%s4375 + $0x139] sm:$0xff]
  %v5113 = vld [vmem:[%s4375 + $0x141] sm:$0xff]
  %v5114 = vld [vmem:[%s4375 + $0x151] sm:$0xff]
  %v5115 = vld [vmem:[%s4375 + $0x159] sm:$0xff]
  %v5116 = vld [vmem:[%s4375 + $0x169] sm:$0xff]
  %v5117 = vld [vmem:[%s4375 + $0x171] sm:$0xff]
  %v5118 = vld [vmem:[%s4375 + $0x1b1] sm:$0xff]
  %v5119 = vld [vmem:[%s4375 + $0x1b9] sm:$0xff]
  %v5120 = vld [vmem:[%s4375 + $0x1c9] sm:$0xff]
  %v5121 = vld [vmem:[%s4375 + $0x1d1] sm:$0xff]
  %v5122 = vld [vmem:[%s4375 + $0x1e1] sm:$0xff]
  %v5123 = vld [vmem:[%s4375 + $0x1e9] sm:$0xff]
  %v5124 = vld [vmem:[%s4375 + $0x1f9] sm:$0xff]
  %v5125 = vld [vmem:[%s4375 + $0x201] sm:$0xff]
  %v5126 = vld [vmem:[%s4375 + $0x211] sm:$0xff]
  %v5127 = vld [vmem:[%s4375 + $0x219] sm:$0xff]
  %v5128 = vld [vmem:[%s4375 + $0x229] sm:$0xff]
  %v5129 = vld [vmem:[%s4375 + $0x231] sm:$0xff]
  %v5130 = vld [vmem:[%s4375 + $0x241] sm:$0xff]
  %v5131 = vld [vmem:[%s4375 + $0x249] sm:$0xff]
  %v5132 = vld [vmem:[%s4375 + $0x259] sm:$0xff]
  %v5133 = vld [vmem:[%s4375 + $0x261] sm:$0xff]
  %v5134 = vld [vmem:[%s4375 + $0x271] sm:$0xff]
  %v5135 = vld [vmem:[%s4375 + $0x279] sm:$0xff]
  %v5136 = vld [vmem:[%s4375 + $0x289] sm:$0xff]
  %v5137 = vld [vmem:[%s4375 + $0x291] sm:$0xff]
  %v5138 = vld [vmem:[%s4375 + $0x2a1] sm:$0xff]
  %v5139 = vld [vmem:[%s4375 + $0x2a9] sm:$0xff]
  %v5140 = vld [vmem:[%s4375 + $0x2b9] sm:$0xff]
  %v5141 = vld [vmem:[%s4375 + $0x2c1] sm:$0xff]
  %v5142 = vld [vmem:[%s4375 + $0x2d1] sm:$0xff]
  %v5143 = vld [vmem:[%s4375 + $0x2d9] sm:$0xff]
  %v5144 = vld [vmem:[%s4375 + $0x2e9] sm:$0xff]
  %v5145 = vld [vmem:[%s4375 + $0x2f1] sm:$0xff]
  %v5146 = vld [vmem:[%s4375 + $0x301] sm:$0xff]
  %v5147 = vld [vmem:[%s4375 + $0x309] sm:$0xff]
  %v5148 = vld [vmem:[%s4375 + $0x319] sm:$0xff]
  %v5149 = vld [vmem:[%s4375 + $0x321] sm:$0xff]
  %s5150 = scalar_lea.vmem %s1, 28
  %v5151 = vld [vmem:[%s5150] sm:$0xf]
  %v5153 = vsel %vm26, %v5086, 0
  %v5156 = vsel %vm26, %v5087, 0
  %v5159 = vsel %vm26, %v5088, 0
  %v5162 = vsel %vm26, %v5089, 0
  %v5165 = vsel %vm26, %v5090, 0
  %v5168 = vsel %vm26, %v5091, 0
  %v5171 = vsel %vm26, %v5092, 0
  %v5174 = vsel %vm26, %v5093, 0
  %v5177 = vsel %vm26, %v5094, 0
  %v5180 = vsel %vm26, %v5095, 0
  %v5183 = vsel %vm26, %v5096, 0
  %v5186 = vsel %vm26, %v5097, 0
  %v5189 = vsel %vm26, %v5098, 0
  %v5192 = vsel %vm26, %v5099, 0
  %v5195 = vsel %vm26, %v5100, 0
  %v5198 = vsel %vm26, %v5101, 0
  %v5201 = vsel %vm26, %v5102, 0
  %v5204 = vsel %vm26, %v5103, 0
  %v5207 = vsel %vm26, %v5104, 0
  %v5210 = vsel %vm26, %v5105, 0
  %v5213 = vsel %vm26, %v5106, 0
  %v5216 = vsel %vm26, %v5107, 0
  %v5219 = vsel %vm26, %v5108, 0
  %v5222 = vsel %vm26, %v5109, 0
  %v5225 = vsel %vm26, %v5110, 0
  %v5228 = vsel %vm26, %v5111, 0
  %v5231 = vsel %vm26, %v5112, 0
  %v5234 = vsel %vm26, %v5113, 0
  %v5237 = vsel %vm26, %v5114, 0
  %v5240 = vsel %vm26, %v5115, 0
  %v5243 = vsel %vm26, %v5116, 0
  %v5246 = vsel %vm26, %v5117, 0
  %v5249 = vsel %vm26, %v5118, 0
  %v5252 = vsel %vm26, %v5119, 0
  %v5255 = vsel %vm26, %v5120, 0
  %v5258 = vsel %vm26, %v5121, 0
  %v5261 = vsel %vm26, %v5122, 0
  %v5264 = vsel %vm26, %v5123, 0
  %v5267 = vsel %vm26, %v5124, 0
  %v5270 = vsel %vm26, %v5125, 0
  %v5273 = vsel %vm26, %v5126, 0
  %v5276 = vsel %vm26, %v5127, 0
  %v5279 = vsel %vm26, %v5128, 0
  %v5282 = vsel %vm26, %v5129, 0
  %v5285 = vsel %vm26, %v5130, 0
  %v5288 = vsel %vm26, %v5131, 0
  %v5291 = vsel %vm26, %v5132, 0
  %v5294 = vsel %vm26, %v5133, 0
  %v5297 = vsel %vm26, %v5134, 0
  %v5300 = vsel %vm26, %v5135, 0
  %v5303 = vsel %vm26, %v5136, 0
  %v5306 = vsel %vm26, %v5137, 0
  %v5309 = vsel %vm26, %v5138, 0
  %v5312 = vsel %vm26, %v5139, 0
  %v5315 = vsel %vm26, %v5140, 0
  %v5318 = vsel %vm26, %v5141, 0
  %v5321 = vsel %vm26, %v5142, 0
  %v5324 = vsel %vm26, %v5143, 0
  %v5327 = vsel %vm26, %v5144, 0
  %v5330 = vsel %vm26, %v5145, 0
  %v5333 = vsel %vm26, %v5146, 0
  %v5336 = vsel %vm26, %v5147, 0
  %v5339 = vsel %vm26, %v5148, 0
  %v5342 = vsel %vm26, %v5149, 0
  %v5345 = vsel %vm566, %v5151, 0
  %5347 = vmatprep.subr.mxu0 0.0
  %5348 = vmatpush1.msra.mxu0 %v5345
  %5349 = vmatprep.subr.mxu0 0.0
  %5350 = vmatpush1.msra.mxu0 0.0
  %5351 = vmatprep.subr.mxu0 0.0
  %5352 = vmatpush1.msra.mxu0 0.0
  %5353 = vmatprep.subr.mxu0 0.0
  %5354 = vmatpush1.msra.mxu0 0.0
  %5355 = vmatprep.subr.mxu0 0.0
  %5356 = vmatpush1.msra.mxu0 0.0
  %5357 = vmatprep.subr.mxu0 0.0
  %5358 = vmatpush1.msra.mxu0 0.0
  %5359 = vmatprep.subr.mxu0 0.0
  %5360 = vmatpush1.msra.mxu0 0.0
  %5361 = vmatprep.subr.mxu0 0.0
  %5362 = vmatpush1.msra.mxu0 0.0
  %5363 = vmatprep.subr.mxu0 0.0
  %5364 = vmatpush1.msra.mxu0 0.0
  %5365 = vmatprep.subr.mxu0 0.0
  %5366 = vmatpush1.msra.mxu0 0.0
  %5367 = vmatprep.subr.mxu0 0.0
  %5368 = vmatpush1.msra.mxu0 0.0
  %5369 = vmatprep.subr.mxu0 0.0
  %5370 = vmatpush1.msra.mxu0 0.0
  %5371 = vmatprep.subr.mxu0 0.0
  %5372 = vmatpush1.msra.mxu0 0.0
  %5373 = vmatprep.subr.mxu0 0.0
  %5374 = vmatpush1.msra.mxu0 0.0
  %5375 = vmatprep.subr.mxu0 0.0
  %5376 = vmatpush1.msra.mxu0 0.0
  %5377 = vmatprep.subr.mxu0 0.0
  %5378 = vmatpush1.msra.mxu0 0.0
  %5379 = vmatprep.subr.mxu0 0.0
  %5380 = vmatpush1.msra.mxu0 0.0
  %5381 = vmatprep.subr.mxu0 0.0
  %5382 = vmatpush1.msra.mxu0 0.0
  %5383 = vmatprep.subr.mxu0 0.0
  %5384 = vmatpush1.msra.mxu0 0.0
  %5385 = vmatprep.subr.mxu0 0.0
  %5386 = vmatpush1.msra.mxu0 0.0
  %5387 = vmatprep.subr.mxu0 0.0
  %5388 = vmatpush1.msra.mxu0 0.0
  %5389 = vmatprep.subr.mxu0 0.0
  %5390 = vmatpush1.msra.mxu0 0.0
  %5391 = vmatprep.subr.mxu0 0.0
  %5392 = vmatpush1.msra.mxu0 0.0
  %5393 = vmatprep.subr.mxu0 0.0
  %5394 = vmatpush1.msra.mxu0 0.0
  %5395 = vmatprep.subr.mxu0 0.0
  %5396 = vmatpush1.msra.mxu0 0.0
  %5397 = vmatprep.subr.mxu0 0.0
  %5398 = vmatpush1.msra.mxu0 0.0
  %5399 = vmatprep.subr.mxu0 0.0
  %5400 = vmatpush1.msra.mxu0 0.0
  %5401 = vmatprep.subr.mxu0 0.0
  %5402 = vmatpush1.msra.mxu0 0.0
  %5403 = vmatprep.subr.mxu0 0.0
  %5404 = vmatpush1.msra.mxu0 0.0
  %5405 = vmatprep.subr.mxu0 0.0
  %5406 = vmatpush1.msra.mxu0 0.0
  %5407 = vmatprep.subr.mxu0 0.0
  %5408 = vmatpush1.msra.mxu0 0.0
  %5409 = vmatprep.subr.mxu0 0.0
  %5410 = vmatpush1.msra.mxu0 0.0
  %5411 = vmatprep.mubr.f32.mxu0 0.0
  %5412 = vmatmul.mubr.f32.gmra.mrb[0].mxu0 %v5153
  %v5413 = vpop.f32.mrb[0].mxu0
  %v5414 = vadd.f32 0.0, %v5413
  %v5415 = vpop.f32.mrb[0].mxu0
  %5416 = vmatprep.mubr.f32.mxu0 0.0
  %5417 = vmatmul.mubr.f32.gmra.mrb[0].mxu0 %v5156
  %v5418 = vpop.f32.mrb[0].mxu0
  %v5419 = vadd.f32 0.0, %v5418
  %v5420 = vpop.f32.mrb[0].mxu0
  %5421 = vmatprep.mubr.f32.mxu0 0.0
  %5422 = vmatmul.mubr.f32.gmra.mrb[0].mxu0 %v5159
  %v5423 = vpop.f32.mrb[0].mxu0
  %v5424 = vadd.f32 0.0, %v5423
  %v5425 = vpop.f32.mrb[0].mxu0
  %5426 = vmatprep.mubr.f32.mxu0 0.0
  %5427 = vmatmul.mubr.f32.gmra.mrb[0].mxu0 %v5162
  %v5428 = vpop.f32.mrb[0].mxu0
  %v5429 = vadd.f32 0.0, %v5428
  %v5430 = vpop.f32.mrb[0].mxu0
  %5431 = vmatprep.mubr.f32.mxu0 0.0
  %5432 = vmatmul.mubr.f32.gmra.mrb[0].mxu0 %v5165
  %v5433 = vpop.f32.mrb[0].mxu0
  %v5434 = vadd.f32 0.0, %v5433
  %v5435 = vpop.f32.mrb[0].mxu0
  %5436 = vmatprep.mubr.f32.mxu0 0.0
  %5437 = vmatmul.mubr.f32.gmra.mrb[0].mxu0 %v5168
  %v5438 = vpop.f32.mrb[0].mxu0
  %v5439 = vadd.f32 0.0, %v5438
  %v5440 = vpop.f32.mrb[0].mxu0
  %5441 = vmatprep.mubr.f32.mxu0 0.0
  %5442 = vmatmul.mubr.f32.gmra.mrb[0].mxu0 %v5171
  %v5443 = vpop.f32.mrb[0].mxu0
  %v5444 = vadd.f32 0.0, %v5443
  %v5445 = vpop.f32.mrb[0].mxu0
  %5446 = vmatprep.mubr.f32.mxu0 0.0
  %5447 = vmatmul.mubr.f32.gmra.mrb[0].mxu0 %v5174
  %v5448 = vpop.f32.mrb[0].mxu0
  %v5449 = vadd.f32 0.0, %v5448
  %v5450 = vpop.f32.mrb[0].mxu0
  %5451 = vmatprep.mubr.f32.mxu0 0.0
  %5452 = vmatmul.mubr.f32.gmra.mrb[0].mxu0 %v5177
  %v5453 = vpop.f32.mrb[0].mxu0
  %v5454 = vadd.f32 0.0, %v5453
  %v5455 = vpop.f32.mrb[0].mxu0
  %5456 = vmatprep.mubr.f32.mxu0 0.0
  %5457 = vmatmul.mubr.f32.gmra.mrb[0].mxu0 %v5180
  %v5458 = vpop.f32.mrb[0].mxu0
  %v5459 = vadd.f32 0.0, %v5458
  %v5460 = vpop.f32.mrb[0].mxu0
  %5461 = vmatprep.mubr.f32.mxu0 0.0
  %5462 = vmatmul.mubr.f32.gmra.mrb[0].mxu0 %v5183
  %v5463 = vpop.f32.mrb[0].mxu0
  %v5464 = vadd.f32 0.0, %v5463
  %v5465 = vpop.f32.mrb[0].mxu0
  %5466 = vmatprep.mubr.f32.mxu0 0.0
  %5467 = vmatmul.mubr.f32.gmra.mrb[0].mxu0 %v5186
  %v5468 = vpop.f32.mrb[0].mxu0
  %v5469 = vadd.f32 0.0, %v5468
  %v5470 = vpop.f32.mrb[0].mxu0
  %5471 = vmatprep.mubr.f32.mxu0 0.0
  %5472 = vmatmul.mubr.f32.gmra.mrb[0].mxu0 %v5189
  %v5473 = vpop.f32.mrb[0].mxu0
  %v5474 = vadd.f32 0.0, %v5473
  %v5475 = vpop.f32.mrb[0].mxu0
  %5476 = vmatprep.mubr.f32.mxu0 0.0
  %5477 = vmatmul.mubr.f32.gmra.mrb[0].mxu0 %v5192
  %v5478 = vpop.f32.mrb[0].mxu0
  %v5479 = vadd.f32 0.0, %v5478
  %v5480 = vpop.f32.mrb[0].mxu0
  %5481 = vmatprep.mubr.f32.mxu0 0.0
  %5482 = vmatmul.mubr.f32.gmra.mrb[0].mxu0 %v5195
  %v5483 = vpop.f32.mrb[0].mxu0
  %v5484 = vadd.f32 0.0, %v5483
  %v5485 = vpop.f32.mrb[0].mxu0
  %5486 = vmatprep.mubr.f32.mxu0 0.0
  %5487 = vmatmul.mubr.f32.gmra.mrb[0].mxu0 %v5198
  %v5488 = vpop.f32.mrb[0].mxu0
  %v5489 = vadd.f32 0.0, %v5488
  %v5490 = vpop.f32.mrb[0].mxu0
  %5491 = vmatprep.mubr.f32.mxu0 0.0
  %5492 = vmatmul.mubr.f32.gmra.mrb[0].mxu0 %v5201
  %v5493 = vpop.f32.mrb[0].mxu0
  %v5494 = vadd.f32 0.0, %v5493
  %v5495 = vpop.f32.mrb[0].mxu0
  %5496 = vmatprep.mubr.f32.mxu0 0.0
  %5497 = vmatmul.mubr.f32.gmra.mrb[0].mxu0 %v5204
  %v5498 = vpop.f32.mrb[0].mxu0
  %v5499 = vadd.f32 0.0, %v5498
  %v5500 = vpop.f32.mrb[0].mxu0
  %5501 = vmatprep.mubr.f32.mxu0 0.0
  %5502 = vmatmul.mubr.f32.gmra.mrb[0].mxu0 %v5207
  %v5503 = vpop.f32.mrb[0].mxu0
  %v5504 = vadd.f32 0.0, %v5503
  %v5505 = vpop.f32.mrb[0].mxu0
  %5506 = vmatprep.mubr.f32.mxu0 0.0
  %5507 = vmatmul.mubr.f32.gmra.mrb[0].mxu0 %v5210
  %v5508 = vpop.f32.mrb[0].mxu0
  %v5509 = vadd.f32 0.0, %v5508
  %v5510 = vpop.f32.mrb[0].mxu0
  %5511 = vmatprep.mubr.f32.mxu0 0.0
  %5512 = vmatmul.mubr.f32.gmra.mrb[0].mxu0 %v5213
  %v5513 = vpop.f32.mrb[0].mxu0
  %v5514 = vadd.f32 0.0, %v5513
  %v5515 = vpop.f32.mrb[0].mxu0
  %5516 = vmatprep.mubr.f32.mxu0 0.0
  %5517 = vmatmul.mubr.f32.gmra.mrb[0].mxu0 %v5216
  %v5518 = vpop.f32.mrb[0].mxu0
  %v5519 = vadd.f32 0.0, %v5518
  %v5520 = vpop.f32.mrb[0].mxu0
  %5521 = vmatprep.mubr.f32.mxu0 0.0
  %5522 = vmatmul.mubr.f32.gmra.mrb[0].mxu0 %v5219
  %v5523 = vpop.f32.mrb[0].mxu0
  %v5524 = vadd.f32 0.0, %v5523
  %v5525 = vpop.f32.mrb[0].mxu0
  %5526 = vmatprep.mubr.f32.mxu0 0.0
  %5527 = vmatmul.mubr.f32.gmra.mrb[0].mxu0 %v5222
  %v5528 = vpop.f32.mrb[0].mxu0
  %v5529 = vadd.f32 0.0, %v5528
  %v5530 = vpop.f32.mrb[0].mxu0
  %5531 = vmatprep.mubr.f32.mxu0 0.0
  %5532 = vmatmul.mubr.f32.gmra.mrb[0].mxu0 %v5225
  %v5533 = vpop.f32.mrb[0].mxu0
  %v5534 = vadd.f32 0.0, %v5533
  %v5535 = vpop.f32.mrb[0].mxu0
  %5536 = vmatprep.mubr.f32.mxu0 0.0
  %5537 = vmatmul.mubr.f32.gmra.mrb[0].mxu0 %v5228
  %v5538 = vpop.f32.mrb[0].mxu0
  %v5539 = vadd.f32 0.0, %v5538
  %v5540 = vpop.f32.mrb[0].mxu0
  %5541 = vmatprep.mubr.f32.mxu0 0.0
  %5542 = vmatmul.mubr.f32.gmra.mrb[0].mxu0 %v5231
  %v5543 = vpop.f32.mrb[0].mxu0
  %v5544 = vadd.f32 0.0, %v5543
  %v5545 = vpop.f32.mrb[0].mxu0
  %5546 = vmatprep.mubr.f32.mxu0 0.0
  %5547 = vmatmul.mubr.f32.gmra.mrb[0].mxu0 %v5234
  %v5548 = vpop.f32.mrb[0].mxu0
  %v5549 = vadd.f32 0.0, %v5548
  %v5550 = vpop.f32.mrb[0].mxu0
  %5551 = vmatprep.mubr.f32.mxu0 0.0
  %5552 = vmatmul.mubr.f32.gmra.mrb[0].mxu0 %v5237
  %v5553 = vpop.f32.mrb[0].mxu0
  %v5554 = vadd.f32 0.0, %v5553
  %v5555 = vpop.f32.mrb[0].mxu0
  %5556 = vmatprep.mubr.f32.mxu0 0.0
  %5557 = vmatmul.mubr.f32.gmra.mrb[0].mxu0 %v5240
  %v5558 = vpop.f32.mrb[0].mxu0
  %v5559 = vadd.f32 0.0, %v5558
  %v5560 = vpop.f32.mrb[0].mxu0
  %5561 = vmatprep.mubr.f32.mxu0 0.0
  %5562 = vmatmul.mubr.f32.gmra.mrb[0].mxu0 %v5243
  %v5563 = vpop.f32.mrb[0].mxu0
  %v5564 = vadd.f32 0.0, %v5563
  %v5565 = vpop.f32.mrb[0].mxu0
  %5566 = vmatprep.mubr.f32.mxu0 0.0
  %5567 = vmatmul.mubr.f32.gmra.mrb[0].mxu0 %v5246
  %v5568 = vpop.f32.mrb[0].mxu0
  %v5569 = vadd.f32 0.0, %v5568
  %v5570 = vpop.f32.mrb[0].mxu0
  %5571 = vmatprep.mubr.f32.mxu0 0.0
  %5572 = vmatmul.mubr.f32.gmra.mrb[0].mxu0 %v5249
  %v5573 = vpop.f32.mrb[0].mxu0
  %v5574 = vadd.f32 0.0, %v5573
  %v5575 = vpop.f32.mrb[0].mxu0
  %5576 = vmatprep.mubr.f32.mxu0 0.0
  %5577 = vmatmul.mubr.f32.gmra.mrb[0].mxu0 %v5252
  %v5578 = vpop.f32.mrb[0].mxu0
  %v5579 = vadd.f32 0.0, %v5578
  %v5580 = vpop.f32.mrb[0].mxu0
  %5581 = vmatprep.mubr.f32.mxu0 0.0
  %5582 = vmatmul.mubr.f32.gmra.mrb[0].mxu0 %v5255
  %v5583 = vpop.f32.mrb[0].mxu0
  %v5584 = vadd.f32 0.0, %v5583
  %v5585 = vpop.f32.mrb[0].mxu0
  %5586 = vmatprep.mubr.f32.mxu0 0.0
  %5587 = vmatmul.mubr.f32.gmra.mrb[0].mxu0 %v5258
  %v5588 = vpop.f32.mrb[0].mxu0
  %v5589 = vadd.f32 0.0, %v5588
  %v5590 = vpop.f32.mrb[0].mxu0
  %5591 = vmatprep.mubr.f32.mxu0 0.0
  %5592 = vmatmul.mubr.f32.gmra.mrb[0].mxu0 %v5261
  %v5593 = vpop.f32.mrb[0].mxu0
  %v5594 = vadd.f32 0.0, %v5593
  %v5595 = vpop.f32.mrb[0].mxu0
  %5596 = vmatprep.mubr.f32.mxu0 0.0
  %5597 = vmatmul.mubr.f32.gmra.mrb[0].mxu0 %v5264
  %v5598 = vpop.f32.mrb[0].mxu0
  %v5599 = vadd.f32 0.0, %v5598
  %v5600 = vpop.f32.mrb[0].mxu0
  %5601 = vmatprep.mubr.f32.mxu0 0.0
  %5602 = vmatmul.mubr.f32.gmra.mrb[0].mxu0 %v5267
  %v5603 = vpop.f32.mrb[0].mxu0
  %v5604 = vadd.f32 0.0, %v5603
  %v5605 = vpop.f32.mrb[0].mxu0
  %5606 = vmatprep.mubr.f32.mxu0 0.0
  %5607 = vmatmul.mubr.f32.gmra.mrb[0].mxu0 %v5270
  %v5608 = vpop.f32.mrb[0].mxu0
  %v5609 = vadd.f32 0.0, %v5608
  %v5610 = vpop.f32.mrb[0].mxu0
  %5611 = vmatprep.mubr.f32.mxu0 0.0
  %5612 = vmatmul.mubr.f32.gmra.mrb[0].mxu0 %v5273
  %v5613 = vpop.f32.mrb[0].mxu0
  %v5614 = vadd.f32 0.0, %v5613
  %v5615 = vpop.f32.mrb[0].mxu0
  %5616 = vmatprep.mubr.f32.mxu0 0.0
  %5617 = vmatmul.mubr.f32.gmra.mrb[0].mxu0 %v5276
  %v5618 = vpop.f32.mrb[0].mxu0
  %v5619 = vadd.f32 0.0, %v5618
  %v5620 = vpop.f32.mrb[0].mxu0
  %5621 = vmatprep.mubr.f32.mxu0 0.0
  %5622 = vmatmul.mubr.f32.gmra.mrb[0].mxu0 %v5279
  %v5623 = vpop.f32.mrb[0].mxu0
  %v5624 = vadd.f32 0.0, %v5623
  %v5625 = vpop.f32.mrb[0].mxu0
  %5626 = vmatprep.mubr.f32.mxu0 0.0
  %5627 = vmatmul.mubr.f32.gmra.mrb[0].mxu0 %v5282
  %v5628 = vpop.f32.mrb[0].mxu0
  %v5629 = vadd.f32 0.0, %v5628
  %v5630 = vpop.f32.mrb[0].mxu0
  %5631 = vmatprep.mubr.f32.mxu0 0.0
  %5632 = vmatmul.mubr.f32.gmra.mrb[0].mxu0 %v5285
  %v5633 = vpop.f32.mrb[0].mxu0
  %v5634 = vadd.f32 0.0, %v5633
  %v5635 = vpop.f32.mrb[0].mxu0
  %5636 = vmatprep.mubr.f32.mxu0 0.0
  %5637 = vmatmul.mubr.f32.gmra.mrb[0].mxu0 %v5288
  %v5638 = vpop.f32.mrb[0].mxu0
  %v5639 = vadd.f32 0.0, %v5638
  %v5640 = vpop.f32.mrb[0].mxu0
  %5641 = vmatprep.mubr.f32.mxu0 0.0
  %5642 = vmatmul.mubr.f32.gmra.mrb[0].mxu0 %v5291
  %v5643 = vpop.f32.mrb[0].mxu0
  %v5644 = vadd.f32 0.0, %v5643
  %v5645 = vpop.f32.mrb[0].mxu0
  %5646 = vmatprep.mubr.f32.mxu0 0.0
  %5647 = vmatmul.mubr.f32.gmra.mrb[0].mxu0 %v5294
  %v5648 = vpop.f32.mrb[0].mxu0
  %v5649 = vadd.f32 0.0, %v5648
  %v5650 = vpop.f32.mrb[0].mxu0
  %5651 = vmatprep.mubr.f32.mxu0 0.0
  %5652 = vmatmul.mubr.f32.gmra.mrb[0].mxu0 %v5297
  %v5653 = vpop.f32.mrb[0].mxu0
  %v5654 = vadd.f32 0.0, %v5653
  %v5655 = vpop.f32.mrb[0].mxu0
  %5656 = vmatprep.mubr.f32.mxu0 0.0
  %5657 = vmatmul.mubr.f32.gmra.mrb[0].mxu0 %v5300
  %v5658 = vpop.f32.mrb[0].mxu0
  %v5659 = vadd.f32 0.0, %v5658
  %v5660 = vpop.f32.mrb[0].mxu0
  %5661 = vmatprep.mubr.f32.mxu0 0.0
  %5662 = vmatmul.mubr.f32.gmra.mrb[0].mxu0 %v5303
  %v5663 = vpop.f32.mrb[0].mxu0
  %v5664 = vadd.f32 0.0, %v5663
  %v5665 = vpop.f32.mrb[0].mxu0
  %5666 = vmatprep.mubr.f32.mxu0 0.0
  %5667 = vmatmul.mubr.f32.gmra.mrb[0].mxu0 %v5306
  %v5668 = vpop.f32.mrb[0].mxu0
  %v5669 = vadd.f32 0.0, %v5668
  %v5670 = vpop.f32.mrb[0].mxu0
  %5671 = vmatprep.mubr.f32.mxu0 0.0
  %5672 = vmatmul.mubr.f32.gmra.mrb[0].mxu0 %v5309
  %v5673 = vpop.f32.mrb[0].mxu0
  %v5674 = vadd.f32 0.0, %v5673
  %v5675 = vpop.f32.mrb[0].mxu0
  %5676 = vmatprep.mubr.f32.mxu0 0.0
  %5677 = vmatmul.mubr.f32.gmra.mrb[0].mxu0 %v5312
  %v5678 = vpop.f32.mrb[0].mxu0
  %v5679 = vadd.f32 0.0, %v5678
  %v5680 = vpop.f32.mrb[0].mxu0
  %5681 = vmatprep.mubr.f32.mxu0 0.0
  %5682 = vmatmul.mubr.f32.gmra.mrb[0].mxu0 %v5315
  %v5683 = vpop.f32.mrb[0].mxu0
  %v5684 = vadd.f32 0.0, %v5683
  %v5685 = vpop.f32.mrb[0].mxu0
  %5686 = vmatprep.mubr.f32.mxu0 0.0
  %5687 = vmatmul.mubr.f32.gmra.mrb[0].mxu0 %v5318
  %v5688 = vpop.f32.mrb[0].mxu0
  %v5689 = vadd.f32 0.0, %v5688
  %v5690 = vpop.f32.mrb[0].mxu0
  %5691 = vmatprep.mubr.f32.mxu0 0.0
  %5692 = vmatmul.mubr.f32.gmra.mrb[0].mxu0 %v5321
  %v5693 = vpop.f32.mrb[0].mxu0
  %v5694 = vadd.f32 0.0, %v5693
  %v5695 = vpop.f32.mrb[0].mxu0
  %5696 = vmatprep.mubr.f32.mxu0 0.0
  %5697 = vmatmul.mubr.f32.gmra.mrb[0].mxu0 %v5324
  %v5698 = vpop.f32.mrb[0].mxu0
  %v5699 = vadd.f32 0.0, %v5698
  %v5700 = vpop.f32.mrb[0].mxu0
  %5701 = vmatprep.mubr.f32.mxu0 0.0
  %5702 = vmatmul.mubr.f32.gmra.mrb[0].mxu0 %v5327
  %v5703 = vpop.f32.mrb[0].mxu0
  %v5704 = vadd.f32 0.0, %v5703
  %v5705 = vpop.f32.mrb[0].mxu0
  %5706 = vmatprep.mubr.f32.mxu0 0.0
  %5707 = vmatmul.mubr.f32.gmra.mrb[0].mxu0 %v5330
  %v5708 = vpop.f32.mrb[0].mxu0
  %v5709 = vadd.f32 0.0, %v5708
  %v5710 = vpop.f32.mrb[0].mxu0
  %5711 = vmatprep.mubr.f32.mxu0 0.0
  %5712 = vmatmul.mubr.f32.gmra.mrb[0].mxu0 %v5333
  %v5713 = vpop.f32.mrb[0].mxu0
  %v5714 = vadd.f32 0.0, %v5713
  %v5715 = vpop.f32.mrb[0].mxu0
  %5716 = vmatprep.mubr.f32.mxu0 0.0
  %5717 = vmatmul.mubr.f32.gmra.mrb[0].mxu0 %v5336
  %v5718 = vpop.f32.mrb[0].mxu0
  %v5719 = vadd.f32 0.0, %v5718
  %v5720 = vpop.f32.mrb[0].mxu0
  %5721 = vmatprep.mubr.f32.mxu0 0.0
  %5722 = vmatmul.mubr.f32.gmra.mrb[0].mxu0 %v5339
  %v5723 = vpop.f32.mrb[0].mxu0
  %v5724 = vadd.f32 0.0, %v5723
  %v5725 = vpop.f32.mrb[0].mxu0
  %5726 = vmatprep.mubr.f32.mxu0 0.0
  %5727 = vmatmul.mubr.f32.gmra.mrb[0].mxu0 %v5342
  %v5728 = vpop.f32.mrb[0].mxu0
  %v5729 = vadd.f32 0.0, %v5728
  %v5730 = vpop.f32.mrb[0].mxu0
  %5731 = vdwg.mxu0
  %v5732 = vadd.f32 %v5022, %v5414
  %v5733 = vadd.f32 %v5023, %v5419
  %v5734 = vadd.f32 %v5024, %v5424
  %v5735 = vadd.f32 %v5025, %v5429
  %v5736 = vadd.f32 %v5026, %v5434
  %v5737 = vadd.f32 %v5027, %v5439
  %v5738 = vadd.f32 %v5028, %v5444
  %v5739 = vadd.f32 %v5029, %v5449
  %v5740 = vadd.f32 %v5030, %v5454
  %v5741 = vadd.f32 %v5031, %v5459
  %v5742 = vadd.f32 %v5032, %v5464
  %v5743 = vadd.f32 %v5033, %v5469
  %v5744 = vadd.f32 %v5034, %v5474
  %v5745 = vadd.f32 %v5035, %v5479
  %v5746 = vadd.f32 %v5036, %v5484
  %v5747 = vadd.f32 %v5037, %v5489
  %v5748 = vadd.f32 %v5038, %v5494
  %v5749 = vadd.f32 %v5039, %v5499
  %v5750 = vadd.f32 %v5040, %v5504
  %v5751 = vadd.f32 %v5041, %v5509
  %v5752 = vadd.f32 %v5042, %v5514
  %v5753 = vadd.f32 %v5043, %v5519
  %v5754 = vadd.f32 %v5044, %v5524
  %v5755 = vadd.f32 %v5045, %v5529
  %v5756 = vadd.f32 %v5046, %v5534
  %v5757 = vadd.f32 %v5047, %v5539
  %v5758 = vadd.f32 %v5048, %v5544
  %v5759 = vadd.f32 %v5049, %v5549
  %v5760 = vadd.f32 %v5050, %v5554
  %v5761 = vadd.f32 %v5051, %v5559
  %v5762 = vadd.f32 %v5052, %v5564
  %v5763 = vadd.f32 %v5053, %v5569
  %v5764 = vadd.f32 %v5054, %v5574
  %v5765 = vadd.f32 %v5055, %v5579
  %v5766 = vadd.f32 %v5056, %v5584
  %v5767 = vadd.f32 %v5057, %v5589
  %v5768 = vadd.f32 %v5058, %v5594
  %v5769 = vadd.f32 %v5059, %v5599
  %v5770 = vadd.f32 %v5060, %v5604
  %v5771 = vadd.f32 %v5061, %v5609
  %v5772 = vadd.f32 %v5062, %v5614
  %v5773 = vadd.f32 %v5063, %v5619
  %v5774 = vadd.f32 %v5064, %v5624
  %v5775 = vadd.f32 %v5065, %v5629
  %v5776 = vadd.f32 %v5066, %v5634
  %v5777 = vadd.f32 %v5067, %v5639
  %v5778 = vadd.f32 %v5068, %v5644
  %v5779 = vadd.f32 %v5069, %v5649
  %v5780 = vadd.f32 %v5070, %v5654
  %v5781 = vadd.f32 %v5071, %v5659
  %v5782 = vadd.f32 %v5072, %v5664
  %v5783 = vadd.f32 %v5073, %v5669
  %v5784 = vadd.f32 %v5074, %v5674
  %v5785 = vadd.f32 %v5075, %v5679
  %v5786 = vadd.f32 %v5076, %v5684
  %v5787 = vadd.f32 %v5077, %v5689
  %v5788 = vadd.f32 %v5078, %v5694
  %v5789 = vadd.f32 %v5079, %v5699
  %v5790 = vadd.f32 %v5080, %v5704
  %v5791 = vadd.f32 %v5081, %v5709
  %v5792 = vadd.f32 %v5082, %v5714
  %v5793 = vadd.f32 %v5083, %v5719
  %v5794 = vadd.f32 %v5084, %v5724
  %v5795 = vadd.f32 %v5085, %v5729
  %v5796 = vld [vmem:[%s4375 + $0x2] sm:$0xff]
  %v5797 = vld [vmem:[%s4375 + $0xa] sm:$0xff]
  %v5798 = vld [vmem:[%s4375 + $0x1a] sm:$0xff]
  %v5799 = vld [vmem:[%s4375 + $0x22] sm:$0xff]
  %v5800 = vld [vmem:[%s4375 + $0x32] sm:$0xff]
  %v5801 = vld [vmem:[%s4375 + $0x3a] sm:$0xff]
  %v5802 = vld [vmem:[%s4375 + $0x4a] sm:$0xff]
  %v5803 = vld [vmem:[%s4375 + $0x52] sm:$0xff]
  %v5804 = vld [vmem:[%s4375 + $0x62] sm:$0xff]
  %v5805 = vld [vmem:[%s4375 + $0x6a] sm:$0xff]
  %v5806 = vld [vmem:[%s4375 + $0x7a] sm:$0xff]
  %v5807 = vld [vmem:[%s4375 + $0x82] sm:$0xff]
  %v5808 = vld [vmem:[%s4375 + $0x92] sm:$0xff]
  %v5809 = vld [vmem:[%s4375 + $0x9a] sm:$0xff]
  %v5810 = vld [vmem:[%s4375 + $0xaa] sm:$0xff]
  %v5811 = vld [vmem:[%s4375 + $0xb2] sm:$0xff]
  %v5812 = vld [vmem:[%s4375 + $0xc2] sm:$0xff]
  %v5813 = vld [vmem:[%s4375 + $0xca] sm:$0xff]
  %v5814 = vld [vmem:[%s4375 + $0xda] sm:$0xff]
  %v5815 = vld [vmem:[%s4375 + $0xe2] sm:$0xff]
  %v5816 = vld [vmem:[%s4375 + $0xf2] sm:$0xff]
  %v5817 = vld [vmem:[%s4375 + $0xfa] sm:$0xff]
  %v5818 = vld [vmem:[%s4375 + $0x10a] sm:$0xff]
  %v5819 = vld [vmem:[%s4375 + $0x112] sm:$0xff]
  %v5820 = vld [vmem:[%s4375 + $0x122] sm:$0xff]
  %v5821 = vld [vmem:[%s4375 + $0x12a] sm:$0xff]
  %v5822 = vld [vmem:[%s4375 + $0x13a] sm:$0xff]
  %v5823 = vld [vmem:[%s4375 + $0x142] sm:$0xff]
  %v5824 = vld [vmem:[%s4375 + $0x152] sm:$0xff]
  %v5825 = vld [vmem:[%s4375 + $0x15a] sm:$0xff]
  %v5826 = vld [vmem:[%s4375 + $0x16a] sm:$0xff]
  %v5827 = vld [vmem:[%s4375 + $0x172] sm:$0xff]
  %v5828 = vld [vmem:[%s4375 + $0x1b2] sm:$0xff]
  %v5829 = vld [vmem:[%s4375 + $0x1ba] sm:$0xff]
  %v5830 = vld [vmem:[%s4375 + $0x1ca] sm:$0xff]
  %v5831 = vld [vmem:[%s4375 + $0x1d2] sm:$0xff]
  %v5832 = vld [vmem:[%s4375 + $0x1e2] sm:$0xff]
  %v5833 = vld [vmem:[%s4375 + $0x1ea] sm:$0xff]
  %v5834 = vld [vmem:[%s4375 + $0x1fa] sm:$0xff]
  %v5835 = vld [vmem:[%s4375 + $0x202] sm:$0xff]
  %v5836 = vld [vmem:[%s4375 + $0x212] sm:$0xff]
  %v5837 = vld [vmem:[%s4375 + $0x21a] sm:$0xff]
  %v5838 = vld [vmem:[%s4375 + $0x22a] sm:$0xff]
  %v5839 = vld [vmem:[%s4375 + $0x232] sm:$0xff]
  %v5840 = vld [vmem:[%s4375 + $0x242] sm:$0xff]
  %v5841 = vld [vmem:[%s4375 + $0x24a] sm:$0xff]
  %v5842 = vld [vmem:[%s4375 + $0x25a] sm:$0xff]
  %v5843 = vld [vmem:[%s4375 + $0x262] sm:$0xff]
  %v5844 = vld [vmem:[%s4375 + $0x272] sm:$0xff]
  %v5845 = vld [vmem:[%s4375 + $0x27a] sm:$0xff]
  %v5846 = vld [vmem:[%s4375 + $0x28a] sm:$0xff]
  %v5847 = vld [vmem:[%s4375 + $0x292] sm:$0xff]
  %v5848 = vld [vmem:[%s4375 + $0x2a2] sm:$0xff]
  %v5849 = vld [vmem:[%s4375 + $0x2aa] sm:$0xff]
  %v5850 = vld [vmem:[%s4375 + $0x2ba] sm:$0xff]
  %v5851 = vld [vmem:[%s4375 + $0x2c2] sm:$0xff]
  %v5852 = vld [vmem:[%s4375 + $0x2d2] sm:$0xff]
  %v5853 = vld [vmem:[%s4375 + $0x2da] sm:$0xff]
  %v5854 = vld [vmem:[%s4375 + $0x2ea] sm:$0xff]
  %v5855 = vld [vmem:[%s4375 + $0x2f2] sm:$0xff]
  %v5856 = vld [vmem:[%s4375 + $0x302] sm:$0xff]
  %v5857 = vld [vmem:[%s4375 + $0x30a] sm:$0xff]
  %v5858 = vld [vmem:[%s4375 + $0x31a] sm:$0xff]
  %v5859 = vld [vmem:[%s4375 + $0x322] sm:$0xff]
  %s5860 = scalar_lea.vmem %s1, 32
  %v5861 = vld [vmem:[%s5860] sm:$0xf]
  %v5863 = vsel %vm26, %v5796, 0
  %v5866 = vsel %vm26, %v5797, 0
  %v5869 = vsel %vm26, %v5798, 0
  %v5872 = vsel %vm26, %v5799, 0
  %v5875 = vsel %vm26, %v5800, 0
  %v5878 = vsel %vm26, %v5801, 0
  %v5881 = vsel %vm26, %v5802, 0
  %v5884 = vsel %vm26, %v5803, 0
  %v5887 = vsel %vm26, %v5804, 0
  %v5890 = vsel %vm26, %v5805, 0
  %v5893 = vsel %vm26, %v5806, 0
  %v5896 = vsel %vm26, %v5807, 0
  %v5899 = vsel %vm26, %v5808, 0
  %v5902 = vsel %vm26, %v5809, 0
  %v5905 = vsel %vm26, %v5810, 0
  %v5908 = vsel %vm26, %v5811, 0
  %v5911 = vsel %vm26, %v5812, 0
  %v5914 = vsel %vm26, %v5813, 0
  %v5917 = vsel %vm26, %v5814, 0
  %v5920 = vsel %vm26, %v5815, 0
  %v5923 = vsel %vm26, %v5816, 0
  %v5926 = vsel %vm26, %v5817, 0
  %v5929 = vsel %vm26, %v5818, 0
  %v5932 = vsel %vm26, %v5819, 0
  %v5935 = vsel %vm26, %v5820, 0
  %v5938 = vsel %vm26, %v5821, 0
  %v5941 = vsel %vm26, %v5822, 0
  %v5944 = vsel %vm26, %v5823, 0
  %v5947 = vsel %vm26, %v5824, 0
  %v5950 = vsel %vm26, %v5825, 0
  %v5953 = vsel %vm26, %v5826, 0
  %v5956 = vsel %vm26, %v5827, 0
  %v5959 = vsel %vm26, %v5828, 0
  %v5962 = vsel %vm26, %v5829, 0
  %v5965 = vsel %vm26, %v5830, 0
  %v5968 = vsel %vm26, %v5831, 0
  %v5971 = vsel %vm26, %v5832, 0
  %v5974 = vsel %vm26, %v5833, 0
  %v5977 = vsel %vm26, %v5834, 0
  %v5980 = vsel %vm26, %v5835, 0
  %v5983 = vsel %vm26, %v5836, 0
  %v5986 = vsel %vm26, %v5837, 0
  %v5989 = vsel %vm26, %v5838, 0
  %v5992 = vsel %vm26, %v5839, 0
  %v5995 = vsel %vm26, %v5840, 0
  %v5998 = vsel %vm26, %v5841, 0
  %v6001 = vsel %vm26, %v5842, 0
  %v6004 = vsel %vm26, %v5843, 0
  %v6007 = vsel %vm26, %v5844, 0
  %v6010 = vsel %vm26, %v5845, 0
  %v6013 = vsel %vm26, %v5846, 0
  %v6016 = vsel %vm26, %v5847, 0
  %v6019 = vsel %vm26, %v5848, 0
  %v6022 = vsel %vm26, %v5849, 0
  %v6025 = vsel %vm26, %v5850, 0
  %v6028 = vsel %vm26, %v5851, 0
  %v6031 = vsel %vm26, %v5852, 0
  %v6034 = vsel %vm26, %v5853, 0
  %v6037 = vsel %vm26, %v5854, 0
  %v6040 = vsel %vm26, %v5855, 0
  %v6043 = vsel %vm26, %v5856, 0
  %v6046 = vsel %vm26, %v5857, 0
  %v6049 = vsel %vm26, %v5858, 0
  %v6052 = vsel %vm26, %v5859, 0
  %v6055 = vsel %vm566, %v5861, 0
  %6057 = vmatprep.subr.mxu0 0.0
  %6058 = vmatpush1.msra.mxu0 %v6055
  %6059 = vmatprep.subr.mxu0 0.0
  %6060 = vmatpush1.msra.mxu0 0.0
  %6061 = vmatprep.subr.mxu0 0.0
  %6062 = vmatpush1.msra.mxu0 0.0
  %6063 = vmatprep.subr.mxu0 0.0
  %6064 = vmatpush1.msra.mxu0 0.0
  %6065 = vmatprep.subr.mxu0 0.0
  %6066 = vmatpush1.msra.mxu0 0.0
  %6067 = vmatprep.subr.mxu0 0.0
  %6068 = vmatpush1.msra.mxu0 0.0
  %6069 = vmatprep.subr.mxu0 0.0
  %6070 = vmatpush1.msra.mxu0 0.0
  %6071 = vmatprep.subr.mxu0 0.0
  %6072 = vmatpush1.msra.mxu0 0.0
  %6073 = vmatprep.subr.mxu0 0.0
  %6074 = vmatpush1.msra.mxu0 0.0
  %6075 = vmatprep.subr.mxu0 0.0
  %6076 = vmatpush1.msra.mxu0 0.0
  %6077 = vmatprep.subr.mxu0 0.0
  %6078 = vmatpush1.msra.mxu0 0.0
  %6079 = vmatprep.subr.mxu0 0.0
  %6080 = vmatpush1.msra.mxu0 0.0
  %6081 = vmatprep.subr.mxu0 0.0
  %6082 = vmatpush1.msra.mxu0 0.0
  %6083 = vmatprep.subr.mxu0 0.0
  %6084 = vmatpush1.msra.mxu0 0.0
  %6085 = vmatprep.subr.mxu0 0.0
  %6086 = vmatpush1.msra.mxu0 0.0
  %6087 = vmatprep.subr.mxu0 0.0
  %6088 = vmatpush1.msra.mxu0 0.0
  %6089 = vmatprep.subr.mxu0 0.0
  %6090 = vmatpush1.msra.mxu0 0.0
  %6091 = vmatprep.subr.mxu0 0.0
  %6092 = vmatpush1.msra.mxu0 0.0
  %6093 = vmatprep.subr.mxu0 0.0
  %6094 = vmatpush1.msra.mxu0 0.0
  %6095 = vmatprep.subr.mxu0 0.0
  %6096 = vmatpush1.msra.mxu0 0.0
  %6097 = vmatprep.subr.mxu0 0.0
  %6098 = vmatpush1.msra.mxu0 0.0
  %6099 = vmatprep.subr.mxu0 0.0
  %6100 = vmatpush1.msra.mxu0 0.0
  %6101 = vmatprep.subr.mxu0 0.0
  %6102 = vmatpush1.msra.mxu0 0.0
  %6103 = vmatprep.subr.mxu0 0.0
  %6104 = vmatpush1.msra.mxu0 0.0
  %6105 = vmatprep.subr.mxu0 0.0
  %6106 = vmatpush1.msra.mxu0 0.0
  %6107 = vmatprep.subr.mxu0 0.0
  %6108 = vmatpush1.msra.mxu0 0.0
  %6109 = vmatprep.subr.mxu0 0.0
  %6110 = vmatpush1.msra.mxu0 0.0
  %6111 = vmatprep.subr.mxu0 0.0
  %6112 = vmatpush1.msra.mxu0 0.0
  %6113 = vmatprep.subr.mxu0 0.0
  %6114 = vmatpush1.msra.mxu0 0.0
  %6115 = vmatprep.subr.mxu0 0.0
  %6116 = vmatpush1.msra.mxu0 0.0
  %6117 = vmatprep.subr.mxu0 0.0
  %6118 = vmatpush1.msra.mxu0 0.0
  %6119 = vmatprep.subr.mxu0 0.0
  %6120 = vmatpush1.msra.mxu0 0.0
  %6121 = vmatprep.mubr.f32.mxu0 0.0
  %6122 = vmatmul.mubr.f32.gmra.mrb[0].mxu0 %v5863
  %v6123 = vpop.f32.mrb[0].mxu0
  %v6124 = vadd.f32 0.0, %v6123
  %v6125 = vpop.f32.mrb[0].mxu0
  %6126 = vmatprep.mubr.f32.mxu0 0.0
  %6127 = vmatmul.mubr.f32.gmra.mrb[0].mxu0 %v5866
  %v6128 = vpop.f32.mrb[0].mxu0
  %v6129 = vadd.f32 0.0, %v6128
  %v6130 = vpop.f32.mrb[0].mxu0
  %6131 = vmatprep.mubr.f32.mxu0 0.0
  %6132 = vmatmul.mubr.f32.gmra.mrb[0].mxu0 %v5869
  %v6133 = vpop.f32.mrb[0].mxu0
  %v6134 = vadd.f32 0.0, %v6133
  %v6135 = vpop.f32.mrb[0].mxu0
  %6136 = vmatprep.mubr.f32.mxu0 0.0
  %6137 = vmatmul.mubr.f32.gmra.mrb[0].mxu0 %v5872
  %v6138 = vpop.f32.mrb[0].mxu0
  %v6139 = vadd.f32 0.0, %v6138
  %v6140 = vpop.f32.mrb[0].mxu0
  %6141 = vmatprep.mubr.f32.mxu0 0.0
  %6142 = vmatmul.mubr.f32.gmra.mrb[0].mxu0 %v5875
  %v6143 = vpop.f32.mrb[0].mxu0
  %v6144 = vadd.f32 0.0, %v6143
  %v6145 = vpop.f32.mrb[0].mxu0
  %6146 = vmatprep.mubr.f32.mxu0 0.0
  %6147 = vmatmul.mubr.f32.gmra.mrb[0].mxu0 %v5878
  %v6148 = vpop.f32.mrb[0].mxu0
  %v6149 = vadd.f32 0.0, %v6148
  %v6150 = vpop.f32.mrb[0].mxu0
  %6151 = vmatprep.mubr.f32.mxu0 0.0
  %6152 = vmatmul.mubr.f32.gmra.mrb[0].mxu0 %v5881
  %v6153 = vpop.f32.mrb[0].mxu0
  %v6154 = vadd.f32 0.0, %v6153
  %v6155 = vpop.f32.mrb[0].mxu0
  %6156 = vmatprep.mubr.f32.mxu0 0.0
  %6157 = vmatmul.mubr.f32.gmra.mrb[0].mxu0 %v5884
  %v6158 = vpop.f32.mrb[0].mxu0
  %v6159 = vadd.f32 0.0, %v6158
  %v6160 = vpop.f32.mrb[0].mxu0
  %6161 = vmatprep.mubr.f32.mxu0 0.0
  %6162 = vmatmul.mubr.f32.gmra.mrb[0].mxu0 %v5887
  %v6163 = vpop.f32.mrb[0].mxu0
  %v6164 = vadd.f32 0.0, %v6163
  %v6165 = vpop.f32.mrb[0].mxu0
  %6166 = vmatprep.mubr.f32.mxu0 0.0
  %6167 = vmatmul.mubr.f32.gmra.mrb[0].mxu0 %v5890
  %v6168 = vpop.f32.mrb[0].mxu0
  %v6169 = vadd.f32 0.0, %v6168
  %v6170 = vpop.f32.mrb[0].mxu0
  %6171 = vmatprep.mubr.f32.mxu0 0.0
  %6172 = vmatmul.mubr.f32.gmra.mrb[0].mxu0 %v5893
  %v6173 = vpop.f32.mrb[0].mxu0
  %v6174 = vadd.f32 0.0, %v6173
  %v6175 = vpop.f32.mrb[0].mxu0
  %6176 = vmatprep.mubr.f32.mxu0 0.0
  %6177 = vmatmul.mubr.f32.gmra.mrb[0].mxu0 %v5896
  %v6178 = vpop.f32.mrb[0].mxu0
  %v6179 = vadd.f32 0.0, %v6178
  %v6180 = vpop.f32.mrb[0].mxu0
  %6181 = vmatprep.mubr.f32.mxu0 0.0
  %6182 = vmatmul.mubr.f32.gmra.mrb[0].mxu0 %v5899
  %v6183 = vpop.f32.mrb[0].mxu0
  %v6184 = vadd.f32 0.0, %v6183
  %v6185 = vpop.f32.mrb[0].mxu0
  %6186 = vmatprep.mubr.f32.mxu0 0.0
  %6187 = vmatmul.mubr.f32.gmra.mrb[0].mxu0 %v5902
  %v6188 = vpop.f32.mrb[0].mxu0
  %v6189 = vadd.f32 0.0, %v6188
  %v6190 = vpop.f32.mrb[0].mxu0
  %6191 = vmatprep.mubr.f32.mxu0 0.0
  %6192 = vmatmul.mubr.f32.gmra.mrb[0].mxu0 %v5905
  %v6193 = vpop.f32.mrb[0].mxu0
  %v6194 = vadd.f32 0.0, %v6193
  %v6195 = vpop.f32.mrb[0].mxu0
  %6196 = vmatprep.mubr.f32.mxu0 0.0
  %6197 = vmatmul.mubr.f32.gmra.mrb[0].mxu0 %v5908
  %v6198 = vpop.f32.mrb[0].mxu0
  %v6199 = vadd.f32 0.0, %v6198
  %v6200 = vpop.f32.mrb[0].mxu0
  %6201 = vmatprep.mubr.f32.mxu0 0.0
  %6202 = vmatmul.mubr.f32.gmra.mrb[0].mxu0 %v5911
  %v6203 = vpop.f32.mrb[0].mxu0
  %v6204 = vadd.f32 0.0, %v6203
  %v6205 = vpop.f32.mrb[0].mxu0
  %6206 = vmatprep.mubr.f32.mxu0 0.0
  %6207 = vmatmul.mubr.f32.gmra.mrb[0].mxu0 %v5914
  %v6208 = vpop.f32.mrb[0].mxu0
  %v6209 = vadd.f32 0.0, %v6208
  %v6210 = vpop.f32.mrb[0].mxu0
  %6211 = vmatprep.mubr.f32.mxu0 0.0
  %6212 = vmatmul.mubr.f32.gmra.mrb[0].mxu0 %v5917
  %v6213 = vpop.f32.mrb[0].mxu0
  %v6214 = vadd.f32 0.0, %v6213
  %v6215 = vpop.f32.mrb[0].mxu0
  %6216 = vmatprep.mubr.f32.mxu0 0.0
  %6217 = vmatmul.mubr.f32.gmra.mrb[0].mxu0 %v5920
  %v6218 = vpop.f32.mrb[0].mxu0
  %v6219 = vadd.f32 0.0, %v6218
  %v6220 = vpop.f32.mrb[0].mxu0
  %6221 = vmatprep.mubr.f32.mxu0 0.0
  %6222 = vmatmul.mubr.f32.gmra.mrb[0].mxu0 %v5923
  %v6223 = vpop.f32.mrb[0].mxu0
  %v6224 = vadd.f32 0.0, %v6223
  %v6225 = vpop.f32.mrb[0].mxu0
  %6226 = vmatprep.mubr.f32.mxu0 0.0
  %6227 = vmatmul.mubr.f32.gmra.mrb[0].mxu0 %v5926
  %v6228 = vpop.f32.mrb[0].mxu0
  %v6229 = vadd.f32 0.0, %v6228
  %v6230 = vpop.f32.mrb[0].mxu0
  %6231 = vmatprep.mubr.f32.mxu0 0.0
  %6232 = vmatmul.mubr.f32.gmra.mrb[0].mxu0 %v5929
  %v6233 = vpop.f32.mrb[0].mxu0
  %v6234 = vadd.f32 0.0, %v6233
  %v6235 = vpop.f32.mrb[0].mxu0
  %6236 = vmatprep.mubr.f32.mxu0 0.0
  %6237 = vmatmul.mubr.f32.gmra.mrb[0].mxu0 %v5932
  %v6238 = vpop.f32.mrb[0].mxu0
  %v6239 = vadd.f32 0.0, %v6238
  %v6240 = vpop.f32.mrb[0].mxu0
  %6241 = vmatprep.mubr.f32.mxu0 0.0
  %6242 = vmatmul.mubr.f32.gmra.mrb[0].mxu0 %v5935
  %v6243 = vpop.f32.mrb[0].mxu0
  %v6244 = vadd.f32 0.0, %v6243
  %v6245 = vpop.f32.mrb[0].mxu0
  %6246 = vmatprep.mubr.f32.mxu0 0.0
  %6247 = vmatmul.mubr.f32.gmra.mrb[0].mxu0 %v5938
  %v6248 = vpop.f32.mrb[0].mxu0
  %v6249 = vadd.f32 0.0, %v6248
  %v6250 = vpop.f32.mrb[0].mxu0
  %6251 = vmatprep.mubr.f32.mxu0 0.0
  %6252 = vmatmul.mubr.f32.gmra.mrb[0].mxu0 %v5941
  %v6253 = vpop.f32.mrb[0].mxu0
  %v6254 = vadd.f32 0.0, %v6253
  %v6255 = vpop.f32.mrb[0].mxu0
  %6256 = vmatprep.mubr.f32.mxu0 0.0
  %6257 = vmatmul.mubr.f32.gmra.mrb[0].mxu0 %v5944
  %v6258 = vpop.f32.mrb[0].mxu0
  %v6259 = vadd.f32 0.0, %v6258
  %v6260 = vpop.f32.mrb[0].mxu0
  %6261 = vmatprep.mubr.f32.mxu0 0.0
  %6262 = vmatmul.mubr.f32.gmra.mrb[0].mxu0 %v5947
  %v6263 = vpop.f32.mrb[0].mxu0
  %v6264 = vadd.f32 0.0, %v6263
  %v6265 = vpop.f32.mrb[0].mxu0
  %6266 = vmatprep.mubr.f32.mxu0 0.0
  %6267 = vmatmul.mubr.f32.gmra.mrb[0].mxu0 %v5950
  %v6268 = vpop.f32.mrb[0].mxu0
  %v6269 = vadd.f32 0.0, %v6268
  %v6270 = vpop.f32.mrb[0].mxu0
  %6271 = vmatprep.mubr.f32.mxu0 0.0
  %6272 = vmatmul.mubr.f32.gmra.mrb[0].mxu0 %v5953
  %v6273 = vpop.f32.mrb[0].mxu0
  %v6274 = vadd.f32 0.0, %v6273
  %v6275 = vpop.f32.mrb[0].mxu0
  %6276 = vmatprep.mubr.f32.mxu0 0.0
  %6277 = vmatmul.mubr.f32.gmra.mrb[0].mxu0 %v5956
  %v6278 = vpop.f32.mrb[0].mxu0
  %v6279 = vadd.f32 0.0, %v6278
  %v6280 = vpop.f32.mrb[0].mxu0
  %6281 = vmatprep.mubr.f32.mxu0 0.0
  %6282 = vmatmul.mubr.f32.gmra.mrb[0].mxu0 %v5959
  %v6283 = vpop.f32.mrb[0].mxu0
  %v6284 = vadd.f32 0.0, %v6283
  %v6285 = vpop.f32.mrb[0].mxu0
  %6286 = vmatprep.mubr.f32.mxu0 0.0
  %6287 = vmatmul.mubr.f32.gmra.mrb[0].mxu0 %v5962
  %v6288 = vpop.f32.mrb[0].mxu0
  %v6289 = vadd.f32 0.0, %v6288
  %v6290 = vpop.f32.mrb[0].mxu0
  %6291 = vmatprep.mubr.f32.mxu0 0.0
  %6292 = vmatmul.mubr.f32.gmra.mrb[0].mxu0 %v5965
  %v6293 = vpop.f32.mrb[0].mxu0
  %v6294 = vadd.f32 0.0, %v6293
  %v6295 = vpop.f32.mrb[0].mxu0
  %6296 = vmatprep.mubr.f32.mxu0 0.0
  %6297 = vmatmul.mubr.f32.gmra.mrb[0].mxu0 %v5968
  %v6298 = vpop.f32.mrb[0].mxu0
  %v6299 = vadd.f32 0.0, %v6298
  %v6300 = vpop.f32.mrb[0].mxu0
  %6301 = vmatprep.mubr.f32.mxu0 0.0
  %6302 = vmatmul.mubr.f32.gmra.mrb[0].mxu0 %v5971
  %v6303 = vpop.f32.mrb[0].mxu0
  %v6304 = vadd.f32 0.0, %v6303
  %v6305 = vpop.f32.mrb[0].mxu0
  %6306 = vmatprep.mubr.f32.mxu0 0.0
  %6307 = vmatmul.mubr.f32.gmra.mrb[0].mxu0 %v5974
  %v6308 = vpop.f32.mrb[0].mxu0
  %v6309 = vadd.f32 0.0, %v6308
  %v6310 = vpop.f32.mrb[0].mxu0
  %6311 = vmatprep.mubr.f32.mxu0 0.0
  %6312 = vmatmul.mubr.f32.gmra.mrb[0].mxu0 %v5977
  %v6313 = vpop.f32.mrb[0].mxu0
  %v6314 = vadd.f32 0.0, %v6313
  %v6315 = vpop.f32.mrb[0].mxu0
  %6316 = vmatprep.mubr.f32.mxu0 0.0
  %6317 = vmatmul.mubr.f32.gmra.mrb[0].mxu0 %v5980
  %v6318 = vpop.f32.mrb[0].mxu0
  %v6319 = vadd.f32 0.0, %v6318
  %v6320 = vpop.f32.mrb[0].mxu0
  %6321 = vmatprep.mubr.f32.mxu0 0.0
  %6322 = vmatmul.mubr.f32.gmra.mrb[0].mxu0 %v5983
  %v6323 = vpop.f32.mrb[0].mxu0
  %v6324 = vadd.f32 0.0, %v6323
  %v6325 = vpop.f32.mrb[0].mxu0
  %6326 = vmatprep.mubr.f32.mxu0 0.0
  %6327 = vmatmul.mubr.f32.gmra.mrb[0].mxu0 %v5986
  %v6328 = vpop.f32.mrb[0].mxu0
  %v6329 = vadd.f32 0.0, %v6328
  %v6330 = vpop.f32.mrb[0].mxu0
  %6331 = vmatprep.mubr.f32.mxu0 0.0
  %6332 = vmatmul.mubr.f32.gmra.mrb[0].mxu0 %v5989
  %v6333 = vpop.f32.mrb[0].mxu0
  %v6334 = vadd.f32 0.0, %v6333
  %v6335 = vpop.f32.mrb[0].mxu0
  %6336 = vmatprep.mubr.f32.mxu0 0.0
  %6337 = vmatmul.mubr.f32.gmra.mrb[0].mxu0 %v5992
  %v6338 = vpop.f32.mrb[0].mxu0
  %v6339 = vadd.f32 0.0, %v6338
  %v6340 = vpop.f32.mrb[0].mxu0
  %6341 = vmatprep.mubr.f32.mxu0 0.0
  %6342 = vmatmul.mubr.f32.gmra.mrb[0].mxu0 %v5995
  %v6343 = vpop.f32.mrb[0].mxu0
  %v6344 = vadd.f32 0.0, %v6343
  %v6345 = vpop.f32.mrb[0].mxu0
  %6346 = vmatprep.mubr.f32.mxu0 0.0
  %6347 = vmatmul.mubr.f32.gmra.mrb[0].mxu0 %v5998
  %v6348 = vpop.f32.mrb[0].mxu0
  %v6349 = vadd.f32 0.0, %v6348
  %v6350 = vpop.f32.mrb[0].mxu0
  %6351 = vmatprep.mubr.f32.mxu0 0.0
  %6352 = vmatmul.mubr.f32.gmra.mrb[0].mxu0 %v6001
  %v6353 = vpop.f32.mrb[0].mxu0
  %v6354 = vadd.f32 0.0, %v6353
  %v6355 = vpop.f32.mrb[0].mxu0
  %6356 = vmatprep.mubr.f32.mxu0 0.0
  %6357 = vmatmul.mubr.f32.gmra.mrb[0].mxu0 %v6004
  %v6358 = vpop.f32.mrb[0].mxu0
  %v6359 = vadd.f32 0.0, %v6358
  %v6360 = vpop.f32.mrb[0].mxu0
  %6361 = vmatprep.mubr.f32.mxu0 0.0
  %6362 = vmatmul.mubr.f32.gmra.mrb[0].mxu0 %v6007
  %v6363 = vpop.f32.mrb[0].mxu0
  %v6364 = vadd.f32 0.0, %v6363
  %v6365 = vpop.f32.mrb[0].mxu0
  %6366 = vmatprep.mubr.f32.mxu0 0.0
  %6367 = vmatmul.mubr.f32.gmra.mrb[0].mxu0 %v6010
  %v6368 = vpop.f32.mrb[0].mxu0
  %v6369 = vadd.f32 0.0, %v6368
  %v6370 = vpop.f32.mrb[0].mxu0
  %6371 = vmatprep.mubr.f32.mxu0 0.0
  %6372 = vmatmul.mubr.f32.gmra.mrb[0].mxu0 %v6013
  %v6373 = vpop.f32.mrb[0].mxu0
  %v6374 = vadd.f32 0.0, %v6373
  %v6375 = vpop.f32.mrb[0].mxu0
  %6376 = vmatprep.mubr.f32.mxu0 0.0
  %6377 = vmatmul.mubr.f32.gmra.mrb[0].mxu0 %v6016
  %v6378 = vpop.f32.mrb[0].mxu0
  %v6379 = vadd.f32 0.0, %v6378
  %v6380 = vpop.f32.mrb[0].mxu0
  %6381 = vmatprep.mubr.f32.mxu0 0.0
  %6382 = vmatmul.mubr.f32.gmra.mrb[0].mxu0 %v6019
  %v6383 = vpop.f32.mrb[0].mxu0
  %v6384 = vadd.f32 0.0, %v6383
  %v6385 = vpop.f32.mrb[0].mxu0
  %6386 = vmatprep.mubr.f32.mxu0 0.0
  %6387 = vmatmul.mubr.f32.gmra.mrb[0].mxu0 %v6022
  %v6388 = vpop.f32.mrb[0].mxu0
  %v6389 = vadd.f32 0.0, %v6388
  %v6390 = vpop.f32.mrb[0].mxu0
  %6391 = vmatprep.mubr.f32.mxu0 0.0
  %6392 = vmatmul.mubr.f32.gmra.mrb[0].mxu0 %v6025
  %v6393 = vpop.f32.mrb[0].mxu0
  %v6394 = vadd.f32 0.0, %v6393
  %v6395 = vpop.f32.mrb[0].mxu0
  %6396 = vmatprep.mubr.f32.mxu0 0.0
  %6397 = vmatmul.mubr.f32.gmra.mrb[0].mxu0 %v6028
  %v6398 = vpop.f32.mrb[0].mxu0
  %v6399 = vadd.f32 0.0, %v6398
  %v6400 = vpop.f32.mrb[0].mxu0
  %6401 = vmatprep.mubr.f32.mxu0 0.0
  %6402 = vmatmul.mubr.f32.gmra.mrb[0].mxu0 %v6031
  %v6403 = vpop.f32.mrb[0].mxu0
  %v6404 = vadd.f32 0.0, %v6403
  %v6405 = vpop.f32.mrb[0].mxu0
  %6406 = vmatprep.mubr.f32.mxu0 0.0
  %6407 = vmatmul.mubr.f32.gmra.mrb[0].mxu0 %v6034
  %v6408 = vpop.f32.mrb[0].mxu0
  %v6409 = vadd.f32 0.0, %v6408
  %v6410 = vpop.f32.mrb[0].mxu0
  %6411 = vmatprep.mubr.f32.mxu0 0.0
  %6412 = vmatmul.mubr.f32.gmra.mrb[0].mxu0 %v6037
  %v6413 = vpop.f32.mrb[0].mxu0
  %v6414 = vadd.f32 0.0, %v6413
  %v6415 = vpop.f32.mrb[0].mxu0
  %6416 = vmatprep.mubr.f32.mxu0 0.0
  %6417 = vmatmul.mubr.f32.gmra.mrb[0].mxu0 %v6040
  %v6418 = vpop.f32.mrb[0].mxu0
  %v6419 = vadd.f32 0.0, %v6418
  %v6420 = vpop.f32.mrb[0].mxu0
  %6421 = vmatprep.mubr.f32.mxu0 0.0
  %6422 = vmatmul.mubr.f32.gmra.mrb[0].mxu0 %v6043
  %v6423 = vpop.f32.mrb[0].mxu0
  %v6424 = vadd.f32 0.0, %v6423
  %v6425 = vpop.f32.mrb[0].mxu0
  %6426 = vmatprep.mubr.f32.mxu0 0.0
  %6427 = vmatmul.mubr.f32.gmra.mrb[0].mxu0 %v6046
  %v6428 = vpop.f32.mrb[0].mxu0
  %v6429 = vadd.f32 0.0, %v6428
  %v6430 = vpop.f32.mrb[0].mxu0
  %6431 = vmatprep.mubr.f32.mxu0 0.0
  %6432 = vmatmul.mubr.f32.gmra.mrb[0].mxu0 %v6049
  %v6433 = vpop.f32.mrb[0].mxu0
  %v6434 = vadd.f32 0.0, %v6433
  %v6435 = vpop.f32.mrb[0].mxu0
  %6436 = vmatprep.mubr.f32.mxu0 0.0
  %6437 = vmatmul.mubr.f32.gmra.mrb[0].mxu0 %v6052
  %v6438 = vpop.f32.mrb[0].mxu0
  %v6439 = vadd.f32 0.0, %v6438
  %v6440 = vpop.f32.mrb[0].mxu0
  %6441 = vdwg.mxu0
  %v6442 = vadd.f32 %v5732, %v6124
  %v6443 = vadd.f32 %v5733, %v6129
  %v6444 = vadd.f32 %v5734, %v6134
  %v6445 = vadd.f32 %v5735, %v6139
  %v6446 = vadd.f32 %v5736, %v6144
  %v6447 = vadd.f32 %v5737, %v6149
  %v6448 = vadd.f32 %v5738, %v6154
  %v6449 = vadd.f32 %v5739, %v6159
  %v6450 = vadd.f32 %v5740, %v6164
  %v6451 = vadd.f32 %v5741, %v6169
  %v6452 = vadd.f32 %v5742, %v6174
  %v6453 = vadd.f32 %v5743, %v6179
  %v6454 = vadd.f32 %v5744, %v6184
  %v6455 = vadd.f32 %v5745, %v6189
  %v6456 = vadd.f32 %v5746, %v6194
  %v6457 = vadd.f32 %v5747, %v6199
  %v6458 = vadd.f32 %v5748, %v6204
  %v6459 = vadd.f32 %v5749, %v6209
  %v6460 = vadd.f32 %v5750, %v6214
  %v6461 = vadd.f32 %v5751, %v6219
  %v6462 = vadd.f32 %v5752, %v6224
  %v6463 = vadd.f32 %v5753, %v6229
  %v6464 = vadd.f32 %v5754, %v6234
  %v6465 = vadd.f32 %v5755, %v6239
  %v6466 = vadd.f32 %v5756, %v6244
  %v6467 = vadd.f32 %v5757, %v6249
  %v6468 = vadd.f32 %v5758, %v6254
  %v6469 = vadd.f32 %v5759, %v6259
  %v6470 = vadd.f32 %v5760, %v6264
  %v6471 = vadd.f32 %v5761, %v6269
  %v6472 = vadd.f32 %v5762, %v6274
  %v6473 = vadd.f32 %v5763, %v6279
  %v6474 = vadd.f32 %v5764, %v6284
  %v6475 = vadd.f32 %v5765, %v6289
  %v6476 = vadd.f32 %v5766, %v6294
  %v6477 = vadd.f32 %v5767, %v6299
  %v6478 = vadd.f32 %v5768, %v6304
  %v6479 = vadd.f32 %v5769, %v6309
  %v6480 = vadd.f32 %v5770, %v6314
  %v6481 = vadd.f32 %v5771, %v6319
  %v6482 = vadd.f32 %v5772, %v6324
  %v6483 = vadd.f32 %v5773, %v6329
  %v6484 = vadd.f32 %v5774, %v6334
  %v6485 = vadd.f32 %v5775, %v6339
  %v6486 = vadd.f32 %v5776, %v6344
  %v6487 = vadd.f32 %v5777, %v6349
  %v6488 = vadd.f32 %v5778, %v6354
  %v6489 = vadd.f32 %v5779, %v6359
  %v6490 = vadd.f32 %v5780, %v6364
  %v6491 = vadd.f32 %v5781, %v6369
  %v6492 = vadd.f32 %v5782, %v6374
  %v6493 = vadd.f32 %v5783, %v6379
  %v6494 = vadd.f32 %v5784, %v6384
  %v6495 = vadd.f32 %v5785, %v6389
  %v6496 = vadd.f32 %v5786, %v6394
  %v6497 = vadd.f32 %v5787, %v6399
  %v6498 = vadd.f32 %v5788, %v6404
  %v6499 = vadd.f32 %v5789, %v6409
  %v6500 = vadd.f32 %v5790, %v6414
  %v6501 = vadd.f32 %v5791, %v6419
  %v6502 = vadd.f32 %v5792, %v6424
  %v6503 = vadd.f32 %v5793, %v6429
  %v6504 = vadd.f32 %v5794, %v6434
  %v6505 = vadd.f32 %v5795, %v6439
  %v6506 = vsel %vm26, %v6442, 0.0
  %v6507 = vsel %vm26, %v6443, 0.0
  %v6508 = vadd.f32 %v6506, %v6507
  %v6509 = vsel %vm26, %v6444, 0.0
  %v6510 = vadd.f32 %v6508, %v6509
  %v6511 = vsel %vm26, %v6445, 0.0
  %v6512 = vadd.f32 %v6510, %v6511
  %v6513 = vsel %vm26, %v6446, 0.0
  %v6514 = vadd.f32 %v6512, %v6513
  %v6515 = vsel %vm26, %v6447, 0.0
  %v6516 = vadd.f32 %v6514, %v6515
  %v6517 = vsel %vm26, %v6448, 0.0
  %v6518 = vadd.f32 %v6516, %v6517
  %v6519 = vsel %vm26, %v6449, 0.0
  %v6520 = vadd.f32 %v6518, %v6519
  %v6521 = vsel %vm26, %v6450, 0.0
  %v6522 = vadd.f32 %v6520, %v6521
  %v6523 = vsel %vm26, %v6451, 0.0
  %v6524 = vadd.f32 %v6522, %v6523
  %v6525 = vsel %vm26, %v6452, 0.0
  %v6526 = vadd.f32 %v6524, %v6525
  %v6527 = vsel %vm26, %v6453, 0.0
  %v6528 = vadd.f32 %v6526, %v6527
  %v6529 = vsel %vm26, %v6454, 0.0
  %v6530 = vadd.f32 %v6528, %v6529
  %v6531 = vsel %vm26, %v6455, 0.0
  %v6532 = vadd.f32 %v6530, %v6531
  %v6533 = vsel %vm26, %v6456, 0.0
  %v6534 = vadd.f32 %v6532, %v6533
  %v6535 = vsel %vm26, %v6457, 0.0
  %v6536 = vadd.f32 %v6534, %v6535
  %v6537 = vsel %vm26, %v6458, 0.0
  %v6538 = vadd.f32 %v6536, %v6537
  %v6539 = vsel %vm26, %v6459, 0.0
  %v6540 = vadd.f32 %v6538, %v6539
  %v6541 = vsel %vm26, %v6460, 0.0
  %v6542 = vadd.f32 %v6540, %v6541
  %v6543 = vsel %vm26, %v6461, 0.0
  %v6544 = vadd.f32 %v6542, %v6543
  %v6545 = vsel %vm26, %v6462, 0.0
  %v6546 = vadd.f32 %v6544, %v6545
  %v6547 = vsel %vm26, %v6463, 0.0
  %v6548 = vadd.f32 %v6546, %v6547
  %v6549 = vsel %vm26, %v6464, 0.0
  %v6550 = vadd.f32 %v6548, %v6549
  %v6551 = vsel %vm26, %v6465, 0.0
  %v6552 = vadd.f32 %v6550, %v6551
  %v6553 = vsel %vm26, %v6466, 0.0
  %v6554 = vadd.f32 %v6552, %v6553
  %v6555 = vsel %vm26, %v6467, 0.0
  %v6556 = vadd.f32 %v6554, %v6555
  %v6557 = vsel %vm26, %v6468, 0.0
  %v6558 = vadd.f32 %v6556, %v6557
  %v6559 = vsel %vm26, %v6469, 0.0
  %v6560 = vadd.f32 %v6558, %v6559
  %v6561 = vsel %vm26, %v6470, 0.0
  %v6562 = vadd.f32 %v6560, %v6561
  %v6563 = vsel %vm26, %v6471, 0.0
  %v6564 = vadd.f32 %v6562, %v6563
  %v6565 = vsel %vm26, %v6472, 0.0
  %v6566 = vadd.f32 %v6564, %v6565
  %v6567 = vsel %vm26, %v6473, 0.0
  %v6568 = vadd.f32 %v6566, %v6567
  %v6569 = vsel %vm26, %v6474, 0.0
  %v6570 = vadd.f32 %v6568, %v6569
  %v6571 = vsel %vm26, %v6475, 0.0
  %v6572 = vadd.f32 %v6570, %v6571
  %v6573 = vsel %vm26, %v6476, 0.0
  %v6574 = vadd.f32 %v6572, %v6573
  %v6575 = vsel %vm26, %v6477, 0.0
  %v6576 = vadd.f32 %v6574, %v6575
  %v6577 = vsel %vm26, %v6478, 0.0
  %v6578 = vadd.f32 %v6576, %v6577
  %v6579 = vsel %vm26, %v6479, 0.0
  %v6580 = vadd.f32 %v6578, %v6579
  %v6581 = vsel %vm26, %v6480, 0.0
  %v6582 = vadd.f32 %v6580, %v6581
  %v6583 = vsel %vm26, %v6481, 0.0
  %v6584 = vadd.f32 %v6582, %v6583
  %v6585 = vsel %vm26, %v6482, 0.0
  %v6586 = vadd.f32 %v6584, %v6585
  %v6587 = vsel %vm26, %v6483, 0.0
  %v6588 = vadd.f32 %v6586, %v6587
  %v6589 = vsel %vm26, %v6484, 0.0
  %v6590 = vadd.f32 %v6588, %v6589
  %v6591 = vsel %vm26, %v6485, 0.0
  %v6592 = vadd.f32 %v6590, %v6591
  %v6593 = vsel %vm26, %v6486, 0.0
  %v6594 = vadd.f32 %v6592, %v6593
  %v6595 = vsel %vm26, %v6487, 0.0
  %v6596 = vadd.f32 %v6594, %v6595
  %v6597 = vsel %vm26, %v6488, 0.0
  %v6598 = vadd.f32 %v6596, %v6597
  %v6599 = vsel %vm26, %v6489, 0.0
  %v6600 = vadd.f32 %v6598, %v6599
  %v6601 = vsel %vm26, %v6490, 0.0
  %v6602 = vadd.f32 %v6600, %v6601
  %v6603 = vsel %vm26, %v6491, 0.0
  %v6604 = vadd.f32 %v6602, %v6603
  %v6605 = vsel %vm26, %v6492, 0.0
  %v6606 = vadd.f32 %v6604, %v6605
  %v6607 = vsel %vm26, %v6493, 0.0
  %v6608 = vadd.f32 %v6606, %v6607
  %v6609 = vsel %vm26, %v6494, 0.0
  %v6610 = vadd.f32 %v6608, %v6609
  %v6611 = vsel %vm26, %v6495, 0.0
  %v6612 = vadd.f32 %v6610, %v6611
  %v6613 = vsel %vm26, %v6496, 0.0
  %v6614 = vadd.f32 %v6612, %v6613
  %v6615 = vsel %vm26, %v6497, 0.0
  %v6616 = vadd.f32 %v6614, %v6615
  %v6617 = vsel %vm26, %v6498, 0.0
  %v6618 = vadd.f32 %v6616, %v6617
  %v6619 = vsel %vm26, %v6499, 0.0
  %v6620 = vadd.f32 %v6618, %v6619
  %v6621 = vsel %vm26, %v6500, 0.0
  %v6622 = vadd.f32 %v6620, %v6621
  %v6623 = vsel %vm26, %v6501, 0.0
  %v6624 = vadd.f32 %v6622, %v6623
  %v6625 = vsel %vm26, %v6502, 0.0
  %v6626 = vadd.f32 %v6624, %v6625
  %v6627 = vsel %vm26, %v6503, 0.0
  %v6628 = vadd.f32 %v6626, %v6627
  %v6629 = vsel %vm26, %v6504, 0.0
  %v6630 = vadd.f32 %v6628, %v6629
  %v6631 = vsel %vm26, %v6505, 0.0
  %v6632 = vadd.f32 %v6630, %v6631
  %v6633 = vrot.slane %v6632, 4
  %v6634 = vadd.f32 %v6632, %v6633
  %v6635 = vrot.slane %v6634, 2
  %v6636 = vadd.f32 %v6634, %v6635
  %v6637 = vrot.slane %v6636, 1
  %v6638 = vadd.f32 %v6636, %v6637
  %v6639 = vmul.f32 %v6638, 0.001953125
  %v6640 = vmul.f32 %v6442, %v6442
  %v6641 = vmul.f32 %v6443, %v6443
  %v6642 = vmul.f32 %v6444, %v6444
  %v6643 = vmul.f32 %v6445, %v6445
  %v6644 = vmul.f32 %v6446, %v6446
  %v6645 = vmul.f32 %v6447, %v6447
  %v6646 = vmul.f32 %v6448, %v6448
  %v6647 = vmul.f32 %v6449, %v6449
  %v6648 = vmul.f32 %v6450, %v6450
  %v6649 = vmul.f32 %v6451, %v6451
  %v6650 = vmul.f32 %v6452, %v6452
  %v6651 = vmul.f32 %v6453, %v6453
  %v6652 = vmul.f32 %v6454, %v6454
  %v6653 = vmul.f32 %v6455, %v6455
  %v6654 = vmul.f32 %v6456, %v6456
  %v6655 = vmul.f32 %v6457, %v6457
  %v6656 = vmul.f32 %v6458, %v6458
  %v6657 = vmul.f32 %v6459, %v6459
  %v6658 = vmul.f32 %v6460, %v6460
  %v6659 = vmul.f32 %v6461, %v6461
  %v6660 = vmul.f32 %v6462, %v6462
  %v6661 = vmul.f32 %v6463, %v6463
  %v6662 = vmul.f32 %v6464, %v6464
  %v6663 = vmul.f32 %v6465, %v6465
  %v6664 = vmul.f32 %v6466, %v6466
  %v6665 = vmul.f32 %v6467, %v6467
  %v6666 = vmul.f32 %v6468, %v6468
  %v6667 = vmul.f32 %v6469, %v6469
  %v6668 = vmul.f32 %v6470, %v6470
  %v6669 = vmul.f32 %v6471, %v6471
  %v6670 = vmul.f32 %v6472, %v6472
  %v6671 = vmul.f32 %v6473, %v6473
  %v6672 = vmul.f32 %v6474, %v6474
  %v6673 = vmul.f32 %v6475, %v6475
  %v6674 = vmul.f32 %v6476, %v6476
  %v6675 = vmul.f32 %v6477, %v6477
  %v6676 = vmul.f32 %v6478, %v6478
  %v6677 = vmul.f32 %v6479, %v6479
  %v6678 = vmul.f32 %v6480, %v6480
  %v6679 = vmul.f32 %v6481, %v6481
  %v6680 = vmul.f32 %v6482, %v6482
  %v6681 = vmul.f32 %v6483, %v6483
  %v6682 = vmul.f32 %v6484, %v6484
  %v6683 = vmul.f32 %v6485, %v6485
  %v6684 = vmul.f32 %v6486, %v6486
  %v6685 = vmul.f32 %v6487, %v6487
  %v6686 = vmul.f32 %v6488, %v6488
  %v6687 = vmul.f32 %v6489, %v6489
  %v6688 = vmul.f32 %v6490, %v6490
  %v6689 = vmul.f32 %v6491, %v6491
  %v6690 = vmul.f32 %v6492, %v6492
  %v6691 = vmul.f32 %v6493, %v6493
  %v6692 = vmul.f32 %v6494, %v6494
  %v6693 = vmul.f32 %v6495, %v6495
  %v6694 = vmul.f32 %v6496, %v6496
  %v6695 = vmul.f32 %v6497, %v6497
  %v6696 = vmul.f32 %v6498, %v6498
  %v6697 = vmul.f32 %v6499, %v6499
  %v6698 = vmul.f32 %v6500, %v6500
  %v6699 = vmul.f32 %v6501, %v6501
  %v6700 = vmul.f32 %v6502, %v6502
  %v6701 = vmul.f32 %v6503, %v6503
  %v6702 = vmul.f32 %v6504, %v6504
  %v6703 = vmul.f32 %v6505, %v6505
  %v6704 = vsel %vm26, %v6640, 0.0
  %v6705 = vsel %vm26, %v6641, 0.0
  %v6706 = vadd.f32 %v6704, %v6705
  %v6707 = vsel %vm26, %v6642, 0.0
  %v6708 = vadd.f32 %v6706, %v6707
  %v6709 = vsel %vm26, %v6643, 0.0
  %v6710 = vadd.f32 %v6708, %v6709
  %v6711 = vsel %vm26, %v6644, 0.0
  %v6712 = vadd.f32 %v6710, %v6711
  %v6713 = vsel %vm26, %v6645, 0.0
  %v6714 = vadd.f32 %v6712, %v6713
  %v6715 = vsel %vm26, %v6646, 0.0
  %v6716 = vadd.f32 %v6714, %v6715
  %v6717 = vsel %vm26, %v6647, 0.0
  %v6718 = vadd.f32 %v6716, %v6717
  %v6719 = vsel %vm26, %v6648, 0.0
  %v6720 = vadd.f32 %v6718, %v6719
  %v6721 = vsel %vm26, %v6649, 0.0
  %v6722 = vadd.f32 %v6720, %v6721
  %v6723 = vsel %vm26, %v6650, 0.0
  %v6724 = vadd.f32 %v6722, %v6723
  %v6725 = vsel %vm26, %v6651, 0.0
  %v6726 = vadd.f32 %v6724, %v6725
  %v6727 = vsel %vm26, %v6652, 0.0
  %v6728 = vadd.f32 %v6726, %v6727
  %v6729 = vsel %vm26, %v6653, 0.0
  %v6730 = vadd.f32 %v6728, %v6729
  %v6731 = vsel %vm26, %v6654, 0.0
  %v6732 = vadd.f32 %v6730, %v6731
  %v6733 = vsel %vm26, %v6655, 0.0
  %v6734 = vadd.f32 %v6732, %v6733
  %v6735 = vsel %vm26, %v6656, 0.0
  %v6736 = vadd.f32 %v6734, %v6735
  %v6737 = vsel %vm26, %v6657, 0.0
  %v6738 = vadd.f32 %v6736, %v6737
  %v6739 = vsel %vm26, %v6658, 0.0
  %v6740 = vadd.f32 %v6738, %v6739
  %v6741 = vsel %vm26, %v6659, 0.0
  %v6742 = vadd.f32 %v6740, %v6741
  %v6743 = vsel %vm26, %v6660, 0.0
  %v6744 = vadd.f32 %v6742, %v6743
  %v6745 = vsel %vm26, %v6661, 0.0
  %v6746 = vadd.f32 %v6744, %v6745
  %v6747 = vsel %vm26, %v6662, 0.0
  %v6748 = vadd.f32 %v6746, %v6747
  %v6749 = vsel %vm26, %v6663, 0.0
  %v6750 = vadd.f32 %v6748, %v6749
  %v6751 = vsel %vm26, %v6664, 0.0
  %v6752 = vadd.f32 %v6750, %v6751
  %v6753 = vsel %vm26, %v6665, 0.0
  %v6754 = vadd.f32 %v6752, %v6753
  %v6755 = vsel %vm26, %v6666, 0.0
  %v6756 = vadd.f32 %v6754, %v6755
  %v6757 = vsel %vm26, %v6667, 0.0
  %v6758 = vadd.f32 %v6756, %v6757
  %v6759 = vsel %vm26, %v6668, 0.0
  %v6760 = vadd.f32 %v6758, %v6759
  %v6761 = vsel %vm26, %v6669, 0.0
  %v6762 = vadd.f32 %v6760, %v6761
  %v6763 = vsel %vm26, %v6670, 0.0
  %v6764 = vadd.f32 %v6762, %v6763
  %v6765 = vsel %vm26, %v6671, 0.0
  %v6766 = vadd.f32 %v6764, %v6765
  %v6767 = vsel %vm26, %v6672, 0.0
  %v6768 = vadd.f32 %v6766, %v6767
  %v6769 = vsel %vm26, %v6673, 0.0
  %v6770 = vadd.f32 %v6768, %v6769
  %v6771 = vsel %vm26, %v6674, 0.0
  %v6772 = vadd.f32 %v6770, %v6771
  %v6773 = vsel %vm26, %v6675, 0.0
  %v6774 = vadd.f32 %v6772, %v6773
  %v6775 = vsel %vm26, %v6676, 0.0
  %v6776 = vadd.f32 %v6774, %v6775
  %v6777 = vsel %vm26, %v6677, 0.0
  %v6778 = vadd.f32 %v6776, %v6777
  %v6779 = vsel %vm26, %v6678, 0.0
  %v6780 = vadd.f32 %v6778, %v6779
  %v6781 = vsel %vm26, %v6679, 0.0
  %v6782 = vadd.f32 %v6780, %v6781
  %v6783 = vsel %vm26, %v6680, 0.0
  %v6784 = vadd.f32 %v6782, %v6783
  %v6785 = vsel %vm26, %v6681, 0.0
  %v6786 = vadd.f32 %v6784, %v6785
  %v6787 = vsel %vm26, %v6682, 0.0
  %v6788 = vadd.f32 %v6786, %v6787
  %v6789 = vsel %vm26, %v6683, 0.0
  %v6790 = vadd.f32 %v6788, %v6789
  %v6791 = vsel %vm26, %v6684, 0.0
  %v6792 = vadd.f32 %v6790, %v6791
  %v6793 = vsel %vm26, %v6685, 0.0
  %v6794 = vadd.f32 %v6792, %v6793
  %v6795 = vsel %vm26, %v6686, 0.0
  %v6796 = vadd.f32 %v6794, %v6795
  %v6797 = vsel %vm26, %v6687, 0.0
  %v6798 = vadd.f32 %v6796, %v6797
  %v6799 = vsel %vm26, %v6688, 0.0
  %v6800 = vadd.f32 %v6798, %v6799
  %v6801 = vsel %vm26, %v6689, 0.0
  %v6802 = vadd.f32 %v6800, %v6801
  %v6803 = vsel %vm26, %v6690, 0.0
  %v6804 = vadd.f32 %v6802, %v6803
  %v6805 = vsel %vm26, %v6691, 0.0
  %v6806 = vadd.f32 %v6804, %v6805
  %v6807 = vsel %vm26, %v6692, 0.0
  %v6808 = vadd.f32 %v6806, %v6807
  %v6809 = vsel %vm26, %v6693, 0.0
  %v6810 = vadd.f32 %v6808, %v6809
  %v6811 = vsel %vm26, %v6694, 0.0
  %v6812 = vadd.f32 %v6810, %v6811
  %v6813 = vsel %vm26, %v6695, 0.0
  %v6814 = vadd.f32 %v6812, %v6813
  %v6815 = vsel %vm26, %v6696, 0.0
  %v6816 = vadd.f32 %v6814, %v6815
  %v6817 = vsel %vm26, %v6697, 0.0
  %v6818 = vadd.f32 %v6816, %v6817
  %v6819 = vsel %vm26, %v6698, 0.0
  %v6820 = vadd.f32 %v6818, %v6819
  %v6821 = vsel %vm26, %v6699, 0.0
  %v6822 = vadd.f32 %v6820, %v6821
  %v6823 = vsel %vm26, %v6700, 0.0
  %v6824 = vadd.f32 %v6822, %v6823
  %v6825 = vsel %vm26, %v6701, 0.0
  %v6826 = vadd.f32 %v6824, %v6825
  %v6827 = vsel %vm26, %v6702, 0.0
  %v6828 = vadd.f32 %v6826, %v6827
  %v6829 = vsel %vm26, %v6703, 0.0
  %v6830 = vadd.f32 %v6828, %v6829
  %v6831 = vrot.slane %v6830, 4
  %v6832 = vadd.f32 %v6830, %v6831
  %v6833 = vrot.slane %v6832, 2
  %v6834 = vadd.f32 %v6832, %v6833
  %v6835 = vrot.slane %v6834, 1
  %v6836 = vadd.f32 %v6834, %v6835
  %v6837 = vmul.f32 %v6836, 0.001953125
  %v6838 = vmul.f32 %v6639, %v6639
  %v6839 = vsub.f32 %v6837, %v6838
  %v6840 = vld [vmem:[%s2] sm:$0x1]
  %v6841 = vadd.f32 %v6839, 1e-05
  %v6842 = vrsqrt.pop %v6841
  %v6843 = vmul.f32 %v6840, %v6842
  %v6844 = vld [vmem:[%s3] sm:$0x1]
  %v6845 = vmul.f32 %v6639, %v6843
  %v6846 = vsub.f32 %v6844, %v6845
  %v6848 = vlaneseq
  %v6849 = vshrl.u32 %v6848, 7
  %v6850 = vsub.s32 0, %v6849
  %v6851 = vrot.slane %v6843, %v6850
  %v6853 = vmul.f32 %v6442, %v6851
  %v6854 = vmul.f32 %v6443, %v6851
  %v6855 = vmul.f32 %v6444, %v6851
  %v6856 = vmul.f32 %v6445, %v6851
  %v6857 = vmul.f32 %v6446, %v6851
  %v6858 = vmul.f32 %v6447, %v6851
  %v6859 = vmul.f32 %v6448, %v6851
  %v6860 = vmul.f32 %v6449, %v6851
  %v6861 = vmul.f32 %v6450, %v6851
  %v6862 = vmul.f32 %v6451, %v6851
  %v6863 = vmul.f32 %v6452, %v6851
  %v6864 = vmul.f32 %v6453, %v6851
  %v6865 = vmul.f32 %v6454, %v6851
  %v6866 = vmul.f32 %v6455, %v6851
  %v6867 = vmul.f32 %v6456, %v6851
  %v6868 = vmul.f32 %v6457, %v6851
  %v6869 = vmul.f32 %v6458, %v6851
  %v6870 = vmul.f32 %v6459, %v6851
  %v6871 = vmul.f32 %v6460, %v6851
  %v6872 = vmul.f32 %v6461, %v6851
  %v6873 = vmul.f32 %v6462, %v6851
  %v6874 = vmul.f32 %v6463, %v6851
  %v6875 = vmul.f32 %v6464, %v6851
  %v6876 = vmul.f32 %v6465, %v6851
  %v6877 = vmul.f32 %v6466, %v6851
  %v6878 = vmul.f32 %v6467, %v6851
  %v6879 = vmul.f32 %v6468, %v6851
  %v6880 = vmul.f32 %v6469, %v6851
  %v6881 = vmul.f32 %v6470, %v6851
  %v6882 = vmul.f32 %v6471, %v6851
  %v6883 = vmul.f32 %v6472, %v6851
  %v6884 = vmul.f32 %v6473, %v6851
  %v6885 = vmul.f32 %v6474, %v6851
  %v6886 = vmul.f32 %v6475, %v6851
  %v6887 = vmul.f32 %v6476, %v6851
  %v6888 = vmul.f32 %v6477, %v6851
  %v6889 = vmul.f32 %v6478, %v6851
  %v6890 = vmul.f32 %v6479, %v6851
  %v6891 = vmul.f32 %v6480, %v6851
  %v6892 = vmul.f32 %v6481, %v6851
  %v6893 = vmul.f32 %v6482, %v6851
  %v6894 = vmul.f32 %v6483, %v6851
  %v6895 = vmul.f32 %v6484, %v6851
  %v6896 = vmul.f32 %v6485, %v6851
  %v6897 = vmul.f32 %v6486, %v6851
  %v6898 = vmul.f32 %v6487, %v6851
  %v6899 = vmul.f32 %v6488, %v6851
  %v6900 = vmul.f32 %v6489, %v6851
  %v6901 = vmul.f32 %v6490, %v6851
  %v6902 = vmul.f32 %v6491, %v6851
  %v6903 = vmul.f32 %v6492, %v6851
  %v6904 = vmul.f32 %v6493, %v6851
  %v6905 = vmul.f32 %v6494, %v6851
  %v6906 = vmul.f32 %v6495, %v6851
  %v6907 = vmul.f32 %v6496, %v6851
  %v6908 = vmul.f32 %v6497, %v6851
  %v6909 = vmul.f32 %v6498, %v6851
  %v6910 = vmul.f32 %v6499, %v6851
  %v6911 = vmul.f32 %v6500, %v6851
  %v6912 = vmul.f32 %v6501, %v6851
  %v6913 = vmul.f32 %v6502, %v6851
  %v6914 = vmul.f32 %v6503, %v6851
  %v6915 = vmul.f32 %v6504, %v6851
  %v6916 = vmul.f32 %v6505, %v6851
  %v6918 = vlaneseq
  %v6919 = vshrl.u32 %v6918, 7
  %v6920 = vsub.s32 0, %v6919
  %v6921 = vrot.slane %v6846, %v6920
  %v6923 = vadd.f32 %v6853, %v6921
  %v6924 = vadd.f32 %v6854, %v6921
  %v6925 = vadd.f32 %v6855, %v6921
  %v6926 = vadd.f32 %v6856, %v6921
  %v6927 = vadd.f32 %v6857, %v6921
  %v6928 = vadd.f32 %v6858, %v6921
  %v6929 = vadd.f32 %v6859, %v6921
  %v6930 = vadd.f32 %v6860, %v6921
  %v6931 = vadd.f32 %v6861, %v6921
  %v6932 = vadd.f32 %v6862, %v6921
  %v6933 = vadd.f32 %v6863, %v6921
  %v6934 = vadd.f32 %v6864, %v6921
  %v6935 = vadd.f32 %v6865, %v6921
  %v6936 = vadd.f32 %v6866, %v6921
  %v6937 = vadd.f32 %v6867, %v6921
  %v6938 = vadd.f32 %v6868, %v6921
  %v6939 = vadd.f32 %v6869, %v6921
  %v6940 = vadd.f32 %v6870, %v6921
  %v6941 = vadd.f32 %v6871, %v6921
  %v6942 = vadd.f32 %v6872, %v6921
  %v6943 = vadd.f32 %v6873, %v6921
  %v6944 = vadd.f32 %v6874, %v6921
  %v6945 = vadd.f32 %v6875, %v6921
  %v6946 = vadd.f32 %v6876, %v6921
  %v6947 = vadd.f32 %v6877, %v6921
  %v6948 = vadd.f32 %v6878, %v6921
  %v6949 = vadd.f32 %v6879, %v6921
  %v6950 = vadd.f32 %v6880, %v6921
  %v6951 = vadd.f32 %v6881, %v6921
  %v6952 = vadd.f32 %v6882, %v6921
  %v6953 = vadd.f32 %v6883, %v6921
  %v6954 = vadd.f32 %v6884, %v6921
  %v6955 = vadd.f32 %v6885, %v6921
  %v6956 = vadd.f32 %v6886, %v6921
  %v6957 = vadd.f32 %v6887, %v6921
  %v6958 = vadd.f32 %v6888, %v6921
  %v6959 = vadd.f32 %v6889, %v6921
  %v6960 = vadd.f32 %v6890, %v6921
  %v6961 = vadd.f32 %v6891, %v6921
  %v6962 = vadd.f32 %v6892, %v6921
  %v6963 = vadd.f32 %v6893, %v6921
  %v6964 = vadd.f32 %v6894, %v6921
  %v6965 = vadd.f32 %v6895, %v6921
  %v6966 = vadd.f32 %v6896, %v6921
  %v6967 = vadd.f32 %v6897, %v6921
  %v6968 = vadd.f32 %v6898, %v6921
  %v6969 = vadd.f32 %v6899, %v6921
  %v6970 = vadd.f32 %v6900, %v6921
  %v6971 = vadd.f32 %v6901, %v6921
  %v6972 = vadd.f32 %v6902, %v6921
  %v6973 = vadd.f32 %v6903, %v6921
  %v6974 = vadd.f32 %v6904, %v6921
  %v6975 = vadd.f32 %v6905, %v6921
  %v6976 = vadd.f32 %v6906, %v6921
  %v6977 = vadd.f32 %v6907, %v6921
  %v6978 = vadd.f32 %v6908, %v6921
  %v6979 = vadd.f32 %v6909, %v6921
  %v6980 = vadd.f32 %v6910, %v6921
  %v6981 = vadd.f32 %v6911, %v6921
  %v6982 = vadd.f32 %v6912, %v6921
  %v6983 = vadd.f32 %v6913, %v6921
  %v6984 = vadd.f32 %v6914, %v6921
  %v6985 = vadd.f32 %v6915, %v6921
  %v6986 = vadd.f32 %v6916, %v6921
  %v6987 = vmax.f32 %v6923, 0.0
  %v6988 = vmax.f32 %v6924, 0.0
  %v6989 = vmax.f32 %v6925, 0.0
  %v6990 = vmax.f32 %v6926, 0.0
  %v6991 = vmax.f32 %v6927, 0.0
  %v6992 = vmax.f32 %v6928, 0.0
  %v6993 = vmax.f32 %v6929, 0.0
  %v6994 = vmax.f32 %v6930, 0.0
  %v6995 = vmax.f32 %v6931, 0.0
  %v6996 = vmax.f32 %v6932, 0.0
  %v6997 = vmax.f32 %v6933, 0.0
  %v6998 = vmax.f32 %v6934, 0.0
  %v6999 = vmax.f32 %v6935, 0.0
  %v7000 = vmax.f32 %v6936, 0.0
  %v7001 = vmax.f32 %v6937, 0.0
  %v7002 = vmax.f32 %v6938, 0.0
  %v7003 = vmax.f32 %v6939, 0.0
  %v7004 = vmax.f32 %v6940, 0.0
  %v7005 = vmax.f32 %v6941, 0.0
  %v7006 = vmax.f32 %v6942, 0.0
  %v7007 = vmax.f32 %v6943, 0.0
  %v7008 = vmax.f32 %v6944, 0.0
  %v7009 = vmax.f32 %v6945, 0.0
  %v7010 = vmax.f32 %v6946, 0.0
  %v7011 = vmax.f32 %v6947, 0.0
  %v7012 = vmax.f32 %v6948, 0.0
  %v7013 = vmax.f32 %v6949, 0.0
  %v7014 = vmax.f32 %v6950, 0.0
  %v7015 = vmax.f32 %v6951, 0.0
  %v7016 = vmax.f32 %v6952, 0.0
  %v7017 = vmax.f32 %v6953, 0.0
  %v7018 = vmax.f32 %v6954, 0.0
  %v7019 = vmax.f32 %v6955, 0.0
  %v7020 = vmax.f32 %v6956, 0.0
  %v7021 = vmax.f32 %v6957, 0.0
  %v7022 = vmax.f32 %v6958, 0.0
  %v7023 = vmax.f32 %v6959, 0.0
  %v7024 = vmax.f32 %v6960, 0.0
  %v7025 = vmax.f32 %v6961, 0.0
  %v7026 = vmax.f32 %v6962, 0.0
  %v7027 = vmax.f32 %v6963, 0.0
  %v7028 = vmax.f32 %v6964, 0.0
  %v7029 = vmax.f32 %v6965, 0.0
  %v7030 = vmax.f32 %v6966, 0.0
  %v7031 = vmax.f32 %v6967, 0.0
  %v7032 = vmax.f32 %v6968, 0.0
  %v7033 = vmax.f32 %v6969, 0.0
  %v7034 = vmax.f32 %v6970, 0.0
  %v7035 = vmax.f32 %v6971, 0.0
  %v7036 = vmax.f32 %v6972, 0.0
  %v7037 = vmax.f32 %v6973, 0.0
  %v7038 = vmax.f32 %v6974, 0.0
  %v7039 = vmax.f32 %v6975, 0.0
  %v7040 = vmax.f32 %v6976, 0.0
  %v7041 = vmax.f32 %v6977, 0.0
  %v7042 = vmax.f32 %v6978, 0.0
  %v7043 = vmax.f32 %v6979, 0.0
  %v7044 = vmax.f32 %v6980, 0.0
  %v7045 = vmax.f32 %v6981, 0.0
  %v7046 = vmax.f32 %v6982, 0.0
  %v7047 = vmax.f32 %v6983, 0.0
  %v7048 = vmax.f32 %v6984, 0.0
  %v7049 = vmax.f32 %v6985, 0.0
  %v7050 = vmax.f32 %v6986, 0.0
  %7051 = vst.msk [vmem:[%s178 + $0x1] sm:$0xff] %vm26, %v6987
  %7052 = vst.msk [vmem:[%s178 + $0x9] sm:$0xff] %vm26, %v6988
  %7053 = vst.msk [vmem:[%s178 + $0x19] sm:$0xff] %vm26, %v6989
  %7054 = vst.msk [vmem:[%s178 + $0x21] sm:$0xff] %vm26, %v6990
  %7055 = vst.msk [vmem:[%s178 + $0x31] sm:$0xff] %vm26, %v6991
  %7056 = vst.msk [vmem:[%s178 + $0x39] sm:$0xff] %vm26, %v6992
  %7057 = vst.msk [vmem:[%s178 + $0x49] sm:$0xff] %vm26, %v6993
  %7058 = vst.msk [vmem:[%s178 + $0x51] sm:$0xff] %vm26, %v6994
  %7059 = vst.msk [vmem:[%s178 + $0x61] sm:$0xff] %vm26, %v6995
  %7060 = vst.msk [vmem:[%s178 + $0x69] sm:$0xff] %vm26, %v6996
  %7061 = vst.msk [vmem:[%s178 + $0x79] sm:$0xff] %vm26, %v6997
  %7062 = vst.msk [vmem:[%s178 + $0x81] sm:$0xff] %vm26, %v6998
  %7063 = vst.msk [vmem:[%s178 + $0x91] sm:$0xff] %vm26, %v6999
  %7064 = vst.msk [vmem:[%s178 + $0x99] sm:$0xff] %vm26, %v7000
  %7065 = vst.msk [vmem:[%s178 + $0xa9] sm:$0xff] %vm26, %v7001
  %7066 = vst.msk [vmem:[%s178 + $0xb1] sm:$0xff] %vm26, %v7002
  %7067 = vst.msk [vmem:[%s178 + $0xc1] sm:$0xff] %vm26, %v7003
  %7068 = vst.msk [vmem:[%s178 + $0xc9] sm:$0xff] %vm26, %v7004
  %7069 = vst.msk [vmem:[%s178 + $0xd9] sm:$0xff] %vm26, %v7005
  %7070 = vst.msk [vmem:[%s178 + $0xe1] sm:$0xff] %vm26, %v7006
  %7071 = vst.msk [vmem:[%s178 + $0xf1] sm:$0xff] %vm26, %v7007
  %7072 = vst.msk [vmem:[%s178 + $0xf9] sm:$0xff] %vm26, %v7008
  %7073 = vst.msk [vmem:[%s178 + $0x109] sm:$0xff] %vm26, %v7009
  %7074 = vst.msk [vmem:[%s178 + $0x111] sm:$0xff] %vm26, %v7010
  %7075 = vst.msk [vmem:[%s178 + $0x121] sm:$0xff] %vm26, %v7011
  %7076 = vst.msk [vmem:[%s178 + $0x129] sm:$0xff] %vm26, %v7012
  %7077 = vst.msk [vmem:[%s178 + $0x139] sm:$0xff] %vm26, %v7013
  %7078 = vst.msk [vmem:[%s178 + $0x141] sm:$0xff] %vm26, %v7014
  %7079 = vst.msk [vmem:[%s178 + $0x151] sm:$0xff] %vm26, %v7015
  %7080 = vst.msk [vmem:[%s178 + $0x159] sm:$0xff] %vm26, %v7016
  %7081 = vst.msk [vmem:[%s178 + $0x169] sm:$0xff] %vm26, %v7017
  %7082 = vst.msk [vmem:[%s178 + $0x171] sm:$0xff] %vm26, %v7018
  %7083 = vst.msk [vmem:[%s178 + $0x1b1] sm:$0xff] %vm26, %v7019
  %7084 = vst.msk [vmem:[%s178 + $0x1b9] sm:$0xff] %vm26, %v7020
  %7085 = vst.msk [vmem:[%s178 + $0x1c9] sm:$0xff] %vm26, %v7021
  %7086 = vst.msk [vmem:[%s178 + $0x1d1] sm:$0xff] %vm26, %v7022
  %7087 = vst.msk [vmem:[%s178 + $0x1e1] sm:$0xff] %vm26, %v7023
  %7088 = vst.msk [vmem:[%s178 + $0x1e9] sm:$0xff] %vm26, %v7024
  %7089 = vst.msk [vmem:[%s178 + $0x1f9] sm:$0xff] %vm26, %v7025
  %7090 = vst.msk [vmem:[%s178 + $0x201] sm:$0xff] %vm26, %v7026
  %7091 = vst.msk [vmem:[%s178 + $0x211] sm:$0xff] %vm26, %v7027
  %7092 = vst.msk [vmem:[%s178 + $0x219] sm:$0xff] %vm26, %v7028
  %7093 = vst.msk [vmem:[%s178 + $0x229] sm:$0xff] %vm26, %v7029
  %7094 = vst.msk [vmem:[%s178 + $0x231] sm:$0xff] %vm26, %v7030
  %7095 = vst.msk [vmem:[%s178 + $0x241] sm:$0xff] %vm26, %v7031
  %7096 = vst.msk [vmem:[%s178 + $0x249] sm:$0xff] %vm26, %v7032
  %7097 = vst.msk [vmem:[%s178 + $0x259] sm:$0xff] %vm26, %v7033
  %7098 = vst.msk [vmem:[%s178 + $0x261] sm:$0xff] %vm26, %v7034
  %7099 = vst.msk [vmem:[%s178 + $0x271] sm:$0xff] %vm26, %v7035
  %7100 = vst.msk [vmem:[%s178 + $0x279] sm:$0xff] %vm26, %v7036
  %7101 = vst.msk [vmem:[%s178 + $0x289] sm:$0xff] %vm26, %v7037
  %7102 = vst.msk [vmem:[%s178 + $0x291] sm:$0xff] %vm26, %v7038
  %7103 = vst.msk [vmem:[%s178 + $0x2a1] sm:$0xff] %vm26, %v7039
  %7104 = vst.msk [vmem:[%s178 + $0x2a9] sm:$0xff] %vm26, %v7040
  %7105 = vst.msk [vmem:[%s178 + $0x2b9] sm:$0xff] %vm26, %v7041
  %7106 = vst.msk [vmem:[%s178 + $0x2c1] sm:$0xff] %vm26, %v7042
  %7107 = vst.msk [vmem:[%s178 + $0x2d1] sm:$0xff] %vm26, %v7043
  %7108 = vst.msk [vmem:[%s178 + $0x2d9] sm:$0xff] %vm26, %v7044
  %7109 = vst.msk [vmem:[%s178 + $0x2e9] sm:$0xff] %vm26, %v7045
  %7110 = vst.msk [vmem:[%s178 + $0x2f1] sm:$0xff] %vm26, %v7046
  %7111 = vst.msk [vmem:[%s178 + $0x301] sm:$0xff] %vm26, %v7047
  %7112 = vst.msk [vmem:[%s178 + $0x309] sm:$0xff] %vm26, %v7048
  %7113 = vst.msk [vmem:[%s178 + $0x319] sm:$0xff] %vm26, %v7049
  %7114 = vst.msk [vmem:[%s178 + $0x321] sm:$0xff] %vm26, %v7050
  %v7115 = vld [vmem:[#allocation2] sm:$0xff]
  %v7116 = vld [vmem:[#allocation2 + $0x8] sm:$0xff]
  %v7117 = vld [vmem:[#allocation2 + $0x18] sm:$0xff]
  %v7118 = vld [vmem:[#allocation2 + $0x20] sm:$0xff]
  %v7119 = vld [vmem:[#allocation2 + $0x30] sm:$0xff]
  %v7120 = vld [vmem:[#allocation2 + $0x38] sm:$0xff]
  %v7121 = vld [vmem:[#allocation2 + $0x48] sm:$0xff]
  %v7122 = vld [vmem:[#allocation2 + $0x50] sm:$0xff]
  %v7123 = vld [vmem:[#allocation2 + $0x60] sm:$0xff]
  %v7124 = vld [vmem:[#allocation2 + $0x68] sm:$0xff]
  %v7125 = vld [vmem:[#allocation2 + $0x78] sm:$0xff]
  %v7126 = vld [vmem:[#allocation2 + $0x80] sm:$0xff]
  %v7127 = vld [vmem:[#allocation2 + $0x90] sm:$0xff]
  %v7128 = vld [vmem:[#allocation2 + $0x98] sm:$0xff]
  %v7129 = vld [vmem:[#allocation2 + $0xa8] sm:$0xff]
  %v7130 = vld [vmem:[#allocation2 + $0xb0] sm:$0xff]
  %v7131 = vld [vmem:[#allocation2 + $0xc0] sm:$0xff]
  %v7132 = vld [vmem:[#allocation2 + $0xc8] sm:$0xff]
  %v7133 = vld [vmem:[#allocation2 + $0xd8] sm:$0xff]
  %v7134 = vld [vmem:[#allocation2 + $0xe0] sm:$0xff]
  %v7135 = vld [vmem:[#allocation2 + $0xf0] sm:$0xff]
  %v7136 = vld [vmem:[#allocation2 + $0xf8] sm:$0xff]
  %v7137 = vld [vmem:[#allocation2 + $0x108] sm:$0xff]
  %v7138 = vld [vmem:[#allocation2 + $0x110] sm:$0xff]
  %v7139 = vld [vmem:[#allocation2 + $0x120] sm:$0xff]
  %v7140 = vld [vmem:[#allocation2 + $0x128] sm:$0xff]
  %v7141 = vld [vmem:[#allocation2 + $0x138] sm:$0xff]
  %v7142 = vld [vmem:[#allocation2 + $0x140] sm:$0xff]
  %v7143 = vld [vmem:[#allocation2 + $0x150] sm:$0xff]
  %v7144 = vld [vmem:[#allocation2 + $0x158] sm:$0xff]
  %v7145 = vld [vmem:[#allocation2 + $0x168] sm:$0xff]
  %v7146 = vld [vmem:[#allocation2 + $0x170] sm:$0xff]
  %v7147 = vld [vmem:[#allocation2 + $0x1b0] sm:$0xff]
  %v7148 = vld [vmem:[#allocation2 + $0x1b8] sm:$0xff]
  %v7149 = vld [vmem:[#allocation2 + $0x1c8] sm:$0xff]
  %v7150 = vld [vmem:[#allocation2 + $0x1d0] sm:$0xff]
  %v7151 = vld [vmem:[#allocation2 + $0x1e0] sm:$0xff]
  %v7152 = vld [vmem:[#allocation2 + $0x1e8] sm:$0xff]
  %v7153 = vld [vmem:[#allocation2 + $0x1f8] sm:$0xff]
  %v7154 = vld [vmem:[#allocation2 + $0x200] sm:$0xff]
  %v7155 = vld [vmem:[#allocation2 + $0x210] sm:$0xff]
  %v7156 = vld [vmem:[#allocation2 + $0x218] sm:$0xff]
  %v7157 = vld [vmem:[#allocation2 + $0x228] sm:$0xff]
  %v7158 = vld [vmem:[#allocation2 + $0x230] sm:$0xff]
  %v7159 = vld [vmem:[#allocation2 + $0x240] sm:$0xff]
  %v7160 = vld [vmem:[#allocation2 + $0x248] sm:$0xff]
  %v7161 = vld [vmem:[#allocation2 + $0x258] sm:$0xff]
  %v7162 = vld [vmem:[#allocation2 + $0x260] sm:$0xff]
  %v7163 = vld [vmem:[#allocation2 + $0x270] sm:$0xff]
  %v7164 = vld [vmem:[#allocation2 + $0x278] sm:$0xff]
  %v7165 = vld [vmem:[#allocation2 + $0x288] sm:$0xff]
  %v7166 = vld [vmem:[#allocation2 + $0x290] sm:$0xff]
  %v7167 = vld [vmem:[#allocation2 + $0x2a0] sm:$0xff]
  %v7168 = vld [vmem:[#allocation2 + $0x2a8] sm:$0xff]
  %v7169 = vld [vmem:[#allocation2 + $0x2b8] sm:$0xff]
  %v7170 = vld [vmem:[#allocation2 + $0x2c0] sm:$0xff]
  %v7171 = vld [vmem:[#allocation2 + $0x2d0] sm:$0xff]
  %v7172 = vld [vmem:[#allocation2 + $0x2d8] sm:$0xff]
  %v7173 = vld [vmem:[#allocation2 + $0x2e8] sm:$0xff]
  %v7174 = vld [vmem:[#allocation2 + $0x2f0] sm:$0xff]
  %v7175 = vld [vmem:[#allocation2 + $0x300] sm:$0xff]
  %v7176 = vld [vmem:[#allocation2 + $0x308] sm:$0xff]
  %v7177 = vld [vmem:[#allocation2 + $0x318] sm:$0xff]
  %v7178 = vld [vmem:[#allocation2 + $0x320] sm:$0xff]
  %v7179 = vld [vmem:[%s4] sm:$0xf]
  %v7180 = vld [vmem:[#allocation2 + $0x1] sm:$0xff]
  %v7181 = vld [vmem:[#allocation2 + $0x9] sm:$0xff]
  %v7182 = vld [vmem:[#allocation2 + $0x19] sm:$0xff]
  %v7183 = vld [vmem:[#allocation2 + $0x21] sm:$0xff]
  %v7184 = vld [vmem:[#allocation2 + $0x31] sm:$0xff]
  %v7185 = vld [vmem:[#allocation2 + $0x39] sm:$0xff]
  %v7186 = vld [vmem:[#allocation2 + $0x49] sm:$0xff]
  %v7187 = vld [vmem:[#allocation2 + $0x51] sm:$0xff]
  %v7188 = vld [vmem:[#allocation2 + $0x61] sm:$0xff]
  %v7189 = vld [vmem:[#allocation2 + $0x69] sm:$0xff]
  %v7190 = vld [vmem:[#allocation2 + $0x79] sm:$0xff]
  %v7191 = vld [vmem:[#allocation2 + $0x81] sm:$0xff]
  %v7192 = vld [vmem:[#allocation2 + $0x91] sm:$0xff]
  %v7193 = vld [vmem:[#allocation2 + $0x99] sm:$0xff]
  %v7194 = vld [vmem:[#allocation2 + $0xa9] sm:$0xff]
  %v7195 = vld [vmem:[#allocation2 + $0xb1] sm:$0xff]
  %v7196 = vld [vmem:[#allocation2 + $0xc1] sm:$0xff]
  %v7197 = vld [vmem:[#allocation2 + $0xc9] sm:$0xff]
  %v7198 = vld [vmem:[#allocation2 + $0xd9] sm:$0xff]
  %v7199 = vld [vmem:[#allocation2 + $0xe1] sm:$0xff]
  %v7200 = vld [vmem:[#allocation2 + $0xf1] sm:$0xff]
  %v7201 = vld [vmem:[#allocation2 + $0xf9] sm:$0xff]
  %v7202 = vld [vmem:[#allocation2 + $0x109] sm:$0xff]
  %v7203 = vld [vmem:[#allocation2 + $0x111] sm:$0xff]
  %v7204 = vld [vmem:[#allocation2 + $0x121] sm:$0xff]
  %v7205 = vld [vmem:[#allocation2 + $0x129] sm:$0xff]
  %v7206 = vld [vmem:[#allocation2 + $0x139] sm:$0xff]
  %v7207 = vld [vmem:[#allocation2 + $0x141] sm:$0xff]
  %v7208 = vld [vmem:[#allocation2 + $0x151] sm:$0xff]
  %v7209 = vld [vmem:[#allocation2 + $0x159] sm:$0xff]
  %v7210 = vld [vmem:[#allocation2 + $0x169] sm:$0xff]
  %v7211 = vld [vmem:[#allocation2 + $0x171] sm:$0xff]
  %v7212 = vld [vmem:[#allocation2 + $0x1b1] sm:$0xff]
  %v7213 = vld [vmem:[#allocation2 + $0x1b9] sm:$0xff]
  %v7214 = vld [vmem:[#allocation2 + $0x1c9] sm:$0xff]
  %v7215 = vld [vmem:[#allocation2 + $0x1d1] sm:$0xff]
  %v7216 = vld [vmem:[#allocation2 + $0x1e1] sm:$0xff]
  %v7217 = vld [vmem:[#allocation2 + $0x1e9] sm:$0xff]
  %v7218 = vld [vmem:[#allocation2 + $0x1f9] sm:$0xff]
  %v7219 = vld [vmem:[#allocation2 + $0x201] sm:$0xff]
  %v7220 = vld [vmem:[#allocation2 + $0x211] sm:$0xff]
  %v7221 = vld [vmem:[#allocation2 + $0x219] sm:$0xff]
  %v7222 = vld [vmem:[#allocation2 + $0x229] sm:$0xff]
  %v7223 = vld [vmem:[#allocation2 + $0x231] sm:$0xff]
  %v7224 = vld [vmem:[#allocation2 + $0x241] sm:$0xff]
  %v7225 = vld [vmem:[#allocation2 + $0x249] sm:$0xff]
  %v7226 = vld [vmem:[#allocation2 + $0x259] sm:$0xff]
  %v7227 = vld [vmem:[#allocation2 + $0x261] sm:$0xff]
  %v7228 = vld [vmem:[#allocation2 + $0x271] sm:$0xff]
  %v7229 = vld [vmem:[#allocation2 + $0x279] sm:$0xff]
  %v7230 = vld [vmem:[#allocation2 + $0x289] sm:$0xff]
  %v7231 = vld [vmem:[#allocation2 + $0x291] sm:$0xff]
  %v7232 = vld [vmem:[#allocation2 + $0x2a1] sm:$0xff]
  %v7233 = vld [vmem:[#allocation2 + $0x2a9] sm:$0xff]
  %v7234 = vld [vmem:[#allocation2 + $0x2b9] sm:$0xff]
  %v7235 = vld [vmem:[#allocation2 + $0x2c1] sm:$0xff]
  %v7236 = vld [vmem:[#allocation2 + $0x2d1] sm:$0xff]
  %v7237 = vld [vmem:[#allocation2 + $0x2d9] sm:$0xff]
  %v7238 = vld [vmem:[#allocation2 + $0x2e9] sm:$0xff]
  %v7239 = vld [vmem:[#allocation2 + $0x2f1] sm:$0xff]
  %v7240 = vld [vmem:[#allocation2 + $0x301] sm:$0xff]
  %v7241 = vld [vmem:[#allocation2 + $0x309] sm:$0xff]
  %v7242 = vld [vmem:[#allocation2 + $0x319] sm:$0xff]
  %v7243 = vld [vmem:[#allocation2 + $0x321] sm:$0xff]
  %s7244 = scalar_lea.vmem %s4, 4
  %v7245 = vld [vmem:[%s7244] sm:$0xf]
  %v7247 = vsel %vm26, %v7180, 0
  %v7250 = vsel %vm26, %v7181, 0
  %v7253 = vsel %vm26, %v7182, 0
  %v7256 = vsel %vm26, %v7183, 0
  %v7259 = vsel %vm26, %v7184, 0
  %v7262 = vsel %vm26, %v7185, 0
  %v7265 = vsel %vm26, %v7186, 0
  %v7268 = vsel %vm26, %v7187, 0
  %v7271 = vsel %vm26, %v7188, 0
  %v7274 = vsel %vm26, %v7189, 0
  %v7277 = vsel %vm26, %v7190, 0
  %v7280 = vsel %vm26, %v7191, 0
  %v7283 = vsel %vm26, %v7192, 0
  %v7286 = vsel %vm26, %v7193, 0
  %v7289 = vsel %vm26, %v7194, 0
  %v7292 = vsel %vm26, %v7195, 0
  %v7295 = vsel %vm26, %v7196, 0
  %v7298 = vsel %vm26, %v7197, 0
  %v7301 = vsel %vm26, %v7198, 0
  %v7304 = vsel %vm26, %v7199, 0
  %v7307 = vsel %vm26, %v7200, 0
  %v7310 = vsel %vm26, %v7201, 0
  %v7313 = vsel %vm26, %v7202, 0
  %v7316 = vsel %vm26, %v7203, 0
  %v7319 = vsel %vm26, %v7204, 0
  %v7322 = vsel %vm26, %v7205, 0
  %v7325 = vsel %vm26, %v7206, 0
  %v7328 = vsel %vm26, %v7207, 0
  %v7331 = vsel %vm26, %v7208, 0
  %v7334 = vsel %vm26, %v7209, 0
  %v7337 = vsel %vm26, %v7210, 0
  %v7340 = vsel %vm26, %v7211, 0
  %v7343 = vsel %vm26, %v7212, 0
  %v7346 = vsel %vm26, %v7213, 0
  %v7349 = vsel %vm26, %v7214, 0
  %v7352 = vsel %vm26, %v7215, 0
  %v7355 = vsel %vm26, %v7216, 0
  %v7358 = vsel %vm26, %v7217, 0
  %v7361 = vsel %vm26, %v7218, 0
  %v7364 = vsel %vm26, %v7219, 0
  %v7367 = vsel %vm26, %v7220, 0
  %v7370 = vsel %vm26, %v7221, 0
  %v7373 = vsel %vm26, %v7222, 0
  %v7376 = vsel %vm26, %v7223, 0
  %v7379 = vsel %vm26, %v7224, 0
  %v7382 = vsel %vm26, %v7225, 0
  %v7385 = vsel %vm26, %v7226, 0
  %v7388 = vsel %vm26, %v7227, 0
  %v7391 = vsel %vm26, %v7228, 0
  %v7394 = vsel %vm26, %v7229, 0
  %v7397 = vsel %vm26, %v7230, 0
  %v7400 = vsel %vm26, %v7231, 0
  %v7403 = vsel %vm26, %v7232, 0
  %v7406 = vsel %vm26, %v7233, 0
  %v7409 = vsel %vm26, %v7234, 0
  %v7412 = vsel %vm26, %v7235, 0
  %v7415 = vsel %vm26, %v7236, 0
  %v7418 = vsel %vm26, %v7237, 0
  %v7421 = vsel %vm26, %v7238, 0
  %v7424 = vsel %vm26, %v7239, 0
  %v7427 = vsel %vm26, %v7240, 0
  %v7430 = vsel %vm26, %v7241, 0
  %v7433 = vsel %vm26, %v7242, 0
  %v7436 = vsel %vm26, %v7243, 0
  %v7439 = vsel %vm566, %v7245, 0
  %7441 = vmatprep.subr.mxu0 0.0
  %7442 = vmatpush1.msra.mxu0 %v7439
  %7443 = vmatprep.subr.mxu0 0.0
  %7444 = vmatpush1.msra.mxu0 0.0
  %7445 = vmatprep.subr.mxu0 0.0
  %7446 = vmatpush1.msra.mxu0 0.0
  %7447 = vmatprep.subr.mxu0 0.0
  %7448 = vmatpush1.msra.mxu0 0.0
  %7449 = vmatprep.subr.mxu0 0.0
  %7450 = vmatpush1.msra.mxu0 0.0
  %7451 = vmatprep.subr.mxu0 0.0
  %7452 = vmatpush1.msra.mxu0 0.0
  %7453 = vmatprep.subr.mxu0 0.0
  %7454 = vmatpush1.msra.mxu0 0.0
  %7455 = vmatprep.subr.mxu0 0.0
  %7456 = vmatpush1.msra.mxu0 0.0
  %7457 = vmatprep.subr.mxu0 0.0
  %7458 = vmatpush1.msra.mxu0 0.0
  %7459 = vmatprep.subr.mxu0 0.0
  %7460 = vmatpush1.msra.mxu0 0.0
  %7461 = vmatprep.subr.mxu0 0.0
  %7462 = vmatpush1.msra.mxu0 0.0
  %7463 = vmatprep.subr.mxu0 0.0
  %7464 = vmatpush1.msra.mxu0 0.0
  %7465 = vmatprep.subr.mxu0 0.0
  %7466 = vmatpush1.msra.mxu0 0.0
  %7467 = vmatprep.subr.mxu0 0.0
  %7468 = vmatpush1.msra.mxu0 0.0
  %7469 = vmatprep.subr.mxu0 0.0
  %7470 = vmatpush1.msra.mxu0 0.0
  %7471 = vmatprep.subr.mxu0 0.0
  %7472 = vmatpush1.msra.mxu0 0.0
  %7473 = vmatprep.subr.mxu0 0.0
  %7474 = vmatpush1.msra.mxu0 0.0
  %7475 = vmatprep.subr.mxu0 0.0
  %7476 = vmatpush1.msra.mxu0 0.0
  %7477 = vmatprep.subr.mxu0 0.0
  %7478 = vmatpush1.msra.mxu0 0.0
  %7479 = vmatprep.subr.mxu0 0.0
  %7480 = vmatpush1.msra.mxu0 0.0
  %7481 = vmatprep.subr.mxu0 0.0
  %7482 = vmatpush1.msra.mxu0 0.0
  %7483 = vmatprep.subr.mxu0 0.0
  %7484 = vmatpush1.msra.mxu0 0.0
  %7485 = vmatprep.subr.mxu0 0.0
  %7486 = vmatpush1.msra.mxu0 0.0
  %7487 = vmatprep.subr.mxu0 0.0
  %7488 = vmatpush1.msra.mxu0 0.0
  %7489 = vmatprep.subr.mxu0 0.0
  %7490 = vmatpush1.msra.mxu0 0.0
  %7491 = vmatprep.subr.mxu0 0.0
  %7492 = vmatpush1.msra.mxu0 0.0
  %7493 = vmatprep.subr.mxu0 0.0
  %7494 = vmatpush1.msra.mxu0 0.0
  %7495 = vmatprep.subr.mxu0 0.0
  %7496 = vmatpush1.msra.mxu0 0.0
  %7497 = vmatprep.subr.mxu0 0.0
  %7498 = vmatpush1.msra.mxu0 0.0
  %7499 = vmatprep.subr.mxu0 0.0
  %7500 = vmatpush1.msra.mxu0 0.0
  %7501 = vmatprep.subr.mxu0 0.0
  %7502 = vmatpush1.msra.mxu0 0.0
  %7503 = vmatprep.subr.mxu0 0.0
  %7504 = vmatpush1.msra.mxu0 0.0
  %7505 = vmatprep.mubr.f32.mxu0 0.0
  %7506 = vmatmul.mubr.f32.gmra.mrb[0].mxu0 %v7247
  %v7507 = vpop.f32.mrb[0].mxu0
  %v7508 = vadd.f32 0.0, %v7507
  %v7509 = vpop.f32.mrb[0].mxu0
  %7510 = vmatprep.mubr.f32.mxu0 0.0
  %7511 = vmatmul.mubr.f32.gmra.mrb[0].mxu0 %v7250
  %v7512 = vpop.f32.mrb[0].mxu0
  %v7513 = vadd.f32 0.0, %v7512
  %v7514 = vpop.f32.mrb[0].mxu0
  %7515 = vmatprep.mubr.f32.mxu0 0.0
  %7516 = vmatmul.mubr.f32.gmra.mrb[0].mxu0 %v7253
  %v7517 = vpop.f32.mrb[0].mxu0
  %v7518 = vadd.f32 0.0, %v7517
  %v7519 = vpop.f32.mrb[0].mxu0
  %7520 = vmatprep.mubr.f32.mxu0 0.0
  %7521 = vmatmul.mubr.f32.gmra.mrb[0].mxu0 %v7256
  %v7522 = vpop.f32.mrb[0].mxu0
  %v7523 = vadd.f32 0.0, %v7522
  %v7524 = vpop.f32.mrb[0].mxu0
  %7525 = vmatprep.mubr.f32.mxu0 0.0
  %7526 = vmatmul.mubr.f32.gmra.mrb[0].mxu0 %v7259
  %v7527 = vpop.f32.mrb[0].mxu0
  %v7528 = vadd.f32 0.0, %v7527
  %v7529 = vpop.f32.mrb[0].mxu0
  %7530 = vmatprep.mubr.f32.mxu0 0.0
  %7531 = vmatmul.mubr.f32.gmra.mrb[0].mxu0 %v7262
  %v7532 = vpop.f32.mrb[0].mxu0
  %v7533 = vadd.f32 0.0, %v7532
  %v7534 = vpop.f32.mrb[0].mxu0
  %7535 = vmatprep.mubr.f32.mxu0 0.0
  %7536 = vmatmul.mubr.f32.gmra.mrb[0].mxu0 %v7265
  %v7537 = vpop.f32.mrb[0].mxu0
  %v7538 = vadd.f32 0.0, %v7537
  %v7539 = vpop.f32.mrb[0].mxu0
  %7540 = vmatprep.mubr.f32.mxu0 0.0
  %7541 = vmatmul.mubr.f32.gmra.mrb[0].mxu0 %v7268
  %v7542 = vpop.f32.mrb[0].mxu0
  %v7543 = vadd.f32 0.0, %v7542
  %v7544 = vpop.f32.mrb[0].mxu0
  %7545 = vmatprep.mubr.f32.mxu0 0.0
  %7546 = vmatmul.mubr.f32.gmra.mrb[0].mxu0 %v7271
  %v7547 = vpop.f32.mrb[0].mxu0
  %v7548 = vadd.f32 0.0, %v7547
  %v7549 = vpop.f32.mrb[0].mxu0
  %7550 = vmatprep.mubr.f32.mxu0 0.0
  %7551 = vmatmul.mubr.f32.gmra.mrb[0].mxu0 %v7274
  %v7552 = vpop.f32.mrb[0].mxu0
  %v7553 = vadd.f32 0.0, %v7552
  %v7554 = vpop.f32.mrb[0].mxu0
  %7555 = vmatprep.mubr.f32.mxu0 0.0
  %7556 = vmatmul.mubr.f32.gmra.mrb[0].mxu0 %v7277
  %v7557 = vpop.f32.mrb[0].mxu0
  %v7558 = vadd.f32 0.0, %v7557
  %v7559 = vpop.f32.mrb[0].mxu0
  %7560 = vmatprep.mubr.f32.mxu0 0.0
  %7561 = vmatmul.mubr.f32.gmra.mrb[0].mxu0 %v7280
  %v7562 = vpop.f32.mrb[0].mxu0
  %v7563 = vadd.f32 0.0, %v7562
  %v7564 = vpop.f32.mrb[0].mxu0
  %7565 = vmatprep.mubr.f32.mxu0 0.0
  %7566 = vmatmul.mubr.f32.gmra.mrb[0].mxu0 %v7283
  %v7567 = vpop.f32.mrb[0].mxu0
  %v7568 = vadd.f32 0.0, %v7567
  %v7569 = vpop.f32.mrb[0].mxu0
  %7570 = vmatprep.mubr.f32.mxu0 0.0
  %7571 = vmatmul.mubr.f32.gmra.mrb[0].mxu0 %v7286
  %v7572 = vpop.f32.mrb[0].mxu0
  %v7573 = vadd.f32 0.0, %v7572
  %v7574 = vpop.f32.mrb[0].mxu0
  %7575 = vmatprep.mubr.f32.mxu0 0.0
  %7576 = vmatmul.mubr.f32.gmra.mrb[0].mxu0 %v7289
  %v7577 = vpop.f32.mrb[0].mxu0
  %v7578 = vadd.f32 0.0, %v7577
  %v7579 = vpop.f32.mrb[0].mxu0
  %7580 = vmatprep.mubr.f32.mxu0 0.0
  %7581 = vmatmul.mubr.f32.gmra.mrb[0].mxu0 %v7292
  %v7582 = vpop.f32.mrb[0].mxu0
  %v7583 = vadd.f32 0.0, %v7582
  %v7584 = vpop.f32.mrb[0].mxu0
  %7585 = vmatprep.mubr.f32.mxu0 0.0
  %7586 = vmatmul.mubr.f32.gmra.mrb[0].mxu0 %v7295
  %v7587 = vpop.f32.mrb[0].mxu0
  %v7588 = vadd.f32 0.0, %v7587
  %v7589 = vpop.f32.mrb[0].mxu0
  %7590 = vmatprep.mubr.f32.mxu0 0.0
  %7591 = vmatmul.mubr.f32.gmra.mrb[0].mxu0 %v7298
  %v7592 = vpop.f32.mrb[0].mxu0
  %v7593 = vadd.f32 0.0, %v7592
  %v7594 = vpop.f32.mrb[0].mxu0
  %7595 = vmatprep.mubr.f32.mxu0 0.0
  %7596 = vmatmul.mubr.f32.gmra.mrb[0].mxu0 %v7301
  %v7597 = vpop.f32.mrb[0].mxu0
  %v7598 = vadd.f32 0.0, %v7597
  %v7599 = vpop.f32.mrb[0].mxu0
  %7600 = vmatprep.mubr.f32.mxu0 0.0
  %7601 = vmatmul.mubr.f32.gmra.mrb[0].mxu0 %v7304
  %v7602 = vpop.f32.mrb[0].mxu0
  %v7603 = vadd.f32 0.0, %v7602
  %v7604 = vpop.f32.mrb[0].mxu0
  %7605 = vmatprep.mubr.f32.mxu0 0.0
  %7606 = vmatmul.mubr.f32.gmra.mrb[0].mxu0 %v7307
  %v7607 = vpop.f32.mrb[0].mxu0
  %v7608 = vadd.f32 0.0, %v7607
  %v7609 = vpop.f32.mrb[0].mxu0
  %7610 = vmatprep.mubr.f32.mxu0 0.0
  %7611 = vmatmul.mubr.f32.gmra.mrb[0].mxu0 %v7310
  %v7612 = vpop.f32.mrb[0].mxu0
  %v7613 = vadd.f32 0.0, %v7612
  %v7614 = vpop.f32.mrb[0].mxu0
  %7615 = vmatprep.mubr.f32.mxu0 0.0
  %7616 = vmatmul.mubr.f32.gmra.mrb[0].mxu0 %v7313
  %v7617 = vpop.f32.mrb[0].mxu0
  %v7618 = vadd.f32 0.0, %v7617
  %v7619 = vpop.f32.mrb[0].mxu0
  %7620 = vmatprep.mubr.f32.mxu0 0.0
  %7621 = vmatmul.mubr.f32.gmra.mrb[0].mxu0 %v7316
  %v7622 = vpop.f32.mrb[0].mxu0
  %v7623 = vadd.f32 0.0, %v7622
  %v7624 = vpop.f32.mrb[0].mxu0
  %7625 = vmatprep.mubr.f32.mxu0 0.0
  %7626 = vmatmul.mubr.f32.gmra.mrb[0].mxu0 %v7319
  %v7627 = vpop.f32.mrb[0].mxu0
  %v7628 = vadd.f32 0.0, %v7627
  %v7629 = vpop.f32.mrb[0].mxu0
  %7630 = vmatprep.mubr.f32.mxu0 0.0
  %7631 = vmatmul.mubr.f32.gmra.mrb[0].mxu0 %v7322
  %v7632 = vpop.f32.mrb[0].mxu0
  %v7633 = vadd.f32 0.0, %v7632
  %v7634 = vpop.f32.mrb[0].mxu0
  %7635 = vmatprep.mubr.f32.mxu0 0.0
  %7636 = vmatmul.mubr.f32.gmra.mrb[0].mxu0 %v7325
  %v7637 = vpop.f32.mrb[0].mxu0
  %v7638 = vadd.f32 0.0, %v7637
  %v7639 = vpop.f32.mrb[0].mxu0
  %7640 = vmatprep.mubr.f32.mxu0 0.0
  %7641 = vmatmul.mubr.f32.gmra.mrb[0].mxu0 %v7328
  %v7642 = vpop.f32.mrb[0].mxu0
  %v7643 = vadd.f32 0.0, %v7642
  %v7644 = vpop.f32.mrb[0].mxu0
  %7645 = vmatprep.mubr.f32.mxu0 0.0
  %7646 = vmatmul.mubr.f32.gmra.mrb[0].mxu0 %v7331
  %v7647 = vpop.f32.mrb[0].mxu0
  %v7648 = vadd.f32 0.0, %v7647
  %v7649 = vpop.f32.mrb[0].mxu0
  %7650 = vmatprep.mubr.f32.mxu0 0.0
  %7651 = vmatmul.mubr.f32.gmra.mrb[0].mxu0 %v7334
  %v7652 = vpop.f32.mrb[0].mxu0
  %v7653 = vadd.f32 0.0, %v7652
  %v7654 = vpop.f32.mrb[0].mxu0
  %7655 = vmatprep.mubr.f32.mxu0 0.0
  %7656 = vmatmul.mubr.f32.gmra.mrb[0].mxu0 %v7337
  %v7657 = vpop.f32.mrb[0].mxu0
  %v7658 = vadd.f32 0.0, %v7657
  %v7659 = vpop.f32.mrb[0].mxu0
  %7660 = vmatprep.mubr.f32.mxu0 0.0
  %7661 = vmatmul.mubr.f32.gmra.mrb[0].mxu0 %v7340
  %v7662 = vpop.f32.mrb[0].mxu0
  %v7663 = vadd.f32 0.0, %v7662
  %v7664 = vpop.f32.mrb[0].mxu0
  %7665 = vmatprep.mubr.f32.mxu0 0.0
  %7666 = vmatmul.mubr.f32.gmra.mrb[0].mxu0 %v7343
  %v7667 = vpop.f32.mrb[0].mxu0
  %v7668 = vadd.f32 0.0, %v7667
  %v7669 = vpop.f32.mrb[0].mxu0
  %7670 = vmatprep.mubr.f32.mxu0 0.0
  %7671 = vmatmul.mubr.f32.gmra.mrb[0].mxu0 %v7346
  %v7672 = vpop.f32.mrb[0].mxu0
  %v7673 = vadd.f32 0.0, %v7672
  %v7674 = vpop.f32.mrb[0].mxu0
  %7675 = vmatprep.mubr.f32.mxu0 0.0
  %7676 = vmatmul.mubr.f32.gmra.mrb[0].mxu0 %v7349
  %v7677 = vpop.f32.mrb[0].mxu0
  %v7678 = vadd.f32 0.0, %v7677
  %v7679 = vpop.f32.mrb[0].mxu0
  %7680 = vmatprep.mubr.f32.mxu0 0.0
  %7681 = vmatmul.mubr.f32.gmra.mrb[0].mxu0 %v7352
  %v7682 = vpop.f32.mrb[0].mxu0
  %v7683 = vadd.f32 0.0, %v7682
  %v7684 = vpop.f32.mrb[0].mxu0
  %7685 = vmatprep.mubr.f32.mxu0 0.0
  %7686 = vmatmul.mubr.f32.gmra.mrb[0].mxu0 %v7355
  %v7687 = vpop.f32.mrb[0].mxu0
  %v7688 = vadd.f32 0.0, %v7687
  %v7689 = vpop.f32.mrb[0].mxu0
  %7690 = vmatprep.mubr.f32.mxu0 0.0
  %7691 = vmatmul.mubr.f32.gmra.mrb[0].mxu0 %v7358
  %v7692 = vpop.f32.mrb[0].mxu0
  %v7693 = vadd.f32 0.0, %v7692
  %v7694 = vpop.f32.mrb[0].mxu0
  %7695 = vmatprep.mubr.f32.mxu0 0.0
  %7696 = vmatmul.mubr.f32.gmra.mrb[0].mxu0 %v7361
  %v7697 = vpop.f32.mrb[0].mxu0
  %v7698 = vadd.f32 0.0, %v7697
  %v7699 = vpop.f32.mrb[0].mxu0
  %7700 = vmatprep.mubr.f32.mxu0 0.0
  %7701 = vmatmul.mubr.f32.gmra.mrb[0].mxu0 %v7364
  %v7702 = vpop.f32.mrb[0].mxu0
  %v7703 = vadd.f32 0.0, %v7702
  %v7704 = vpop.f32.mrb[0].mxu0
  %7705 = vmatprep.mubr.f32.mxu0 0.0
  %7706 = vmatmul.mubr.f32.gmra.mrb[0].mxu0 %v7367
  %v7707 = vpop.f32.mrb[0].mxu0
  %v7708 = vadd.f32 0.0, %v7707
  %v7709 = vpop.f32.mrb[0].mxu0
  %7710 = vmatprep.mubr.f32.mxu0 0.0
  %7711 = vmatmul.mubr.f32.gmra.mrb[0].mxu0 %v7370
  %v7712 = vpop.f32.mrb[0].mxu0
  %v7713 = vadd.f32 0.0, %v7712
  %v7714 = vpop.f32.mrb[0].mxu0
  %7715 = vmatprep.mubr.f32.mxu0 0.0
  %7716 = vmatmul.mubr.f32.gmra.mrb[0].mxu0 %v7373
  %v7717 = vpop.f32.mrb[0].mxu0
  %v7718 = vadd.f32 0.0, %v7717
  %v7719 = vpop.f32.mrb[0].mxu0
  %7720 = vmatprep.mubr.f32.mxu0 0.0
  %7721 = vmatmul.mubr.f32.gmra.mrb[0].mxu0 %v7376
  %v7722 = vpop.f32.mrb[0].mxu0
  %v7723 = vadd.f32 0.0, %v7722
  %v7724 = vpop.f32.mrb[0].mxu0
  %7725 = vmatprep.mubr.f32.mxu0 0.0
  %7726 = vmatmul.mubr.f32.gmra.mrb[0].mxu0 %v7379
  %v7727 = vpop.f32.mrb[0].mxu0
  %v7728 = vadd.f32 0.0, %v7727
  %v7729 = vpop.f32.mrb[0].mxu0
  %7730 = vmatprep.mubr.f32.mxu0 0.0
  %7731 = vmatmul.mubr.f32.gmra.mrb[0].mxu0 %v7382
  %v7732 = vpop.f32.mrb[0].mxu0
  %v7733 = vadd.f32 0.0, %v7732
  %v7734 = vpop.f32.mrb[0].mxu0
  %7735 = vmatprep.mubr.f32.mxu0 0.0
  %7736 = vmatmul.mubr.f32.gmra.mrb[0].mxu0 %v7385
  %v7737 = vpop.f32.mrb[0].mxu0
  %v7738 = vadd.f32 0.0, %v7737
  %v7739 = vpop.f32.mrb[0].mxu0
  %7740 = vmatprep.mubr.f32.mxu0 0.0
  %7741 = vmatmul.mubr.f32.gmra.mrb[0].mxu0 %v7388
  %v7742 = vpop.f32.mrb[0].mxu0
  %v7743 = vadd.f32 0.0, %v7742
  %v7744 = vpop.f32.mrb[0].mxu0
  %7745 = vmatprep.mubr.f32.mxu0 0.0
  %7746 = vmatmul.mubr.f32.gmra.mrb[0].mxu0 %v7391
  %v7747 = vpop.f32.mrb[0].mxu0
  %v7748 = vadd.f32 0.0, %v7747
  %v7749 = vpop.f32.mrb[0].mxu0
  %7750 = vmatprep.mubr.f32.mxu0 0.0
  %7751 = vmatmul.mubr.f32.gmra.mrb[0].mxu0 %v7394
  %v7752 = vpop.f32.mrb[0].mxu0
  %v7753 = vadd.f32 0.0, %v7752
  %v7754 = vpop.f32.mrb[0].mxu0
  %7755 = vmatprep.mubr.f32.mxu0 0.0
  %7756 = vmatmul.mubr.f32.gmra.mrb[0].mxu0 %v7397
  %v7757 = vpop.f32.mrb[0].mxu0
  %v7758 = vadd.f32 0.0, %v7757
  %v7759 = vpop.f32.mrb[0].mxu0
  %7760 = vmatprep.mubr.f32.mxu0 0.0
  %7761 = vmatmul.mubr.f32.gmra.mrb[0].mxu0 %v7400
  %v7762 = vpop.f32.mrb[0].mxu0
  %v7763 = vadd.f32 0.0, %v7762
  %v7764 = vpop.f32.mrb[0].mxu0
  %7765 = vmatprep.mubr.f32.mxu0 0.0
  %7766 = vmatmul.mubr.f32.gmra.mrb[0].mxu0 %v7403
  %v7767 = vpop.f32.mrb[0].mxu0
  %v7768 = vadd.f32 0.0, %v7767
  %v7769 = vpop.f32.mrb[0].mxu0
  %7770 = vmatprep.mubr.f32.mxu0 0.0
  %7771 = vmatmul.mubr.f32.gmra.mrb[0].mxu0 %v7406
  %v7772 = vpop.f32.mrb[0].mxu0
  %v7773 = vadd.f32 0.0, %v7772
  %v7774 = vpop.f32.mrb[0].mxu0
  %7775 = vmatprep.mubr.f32.mxu0 0.0
  %7776 = vmatmul.mubr.f32.gmra.mrb[0].mxu0 %v7409
  %v7777 = vpop.f32.mrb[0].mxu0
  %v7778 = vadd.f32 0.0, %v7777
  %v7779 = vpop.f32.mrb[0].mxu0
  %7780 = vmatprep.mubr.f32.mxu0 0.0
  %7781 = vmatmul.mubr.f32.gmra.mrb[0].mxu0 %v7412
  %v7782 = vpop.f32.mrb[0].mxu0
  %v7783 = vadd.f32 0.0, %v7782
  %v7784 = vpop.f32.mrb[0].mxu0
  %7785 = vmatprep.mubr.f32.mxu0 0.0
  %7786 = vmatmul.mubr.f32.gmra.mrb[0].mxu0 %v7415
  %v7787 = vpop.f32.mrb[0].mxu0
  %v7788 = vadd.f32 0.0, %v7787
  %v7789 = vpop.f32.mrb[0].mxu0
  %7790 = vmatprep.mubr.f32.mxu0 0.0
  %7791 = vmatmul.mubr.f32.gmra.mrb[0].mxu0 %v7418
  %v7792 = vpop.f32.mrb[0].mxu0
  %v7793 = vadd.f32 0.0, %v7792
  %v7794 = vpop.f32.mrb[0].mxu0
  %7795 = vmatprep.mubr.f32.mxu0 0.0
  %7796 = vmatmul.mubr.f32.gmra.mrb[0].mxu0 %v7421
  %v7797 = vpop.f32.mrb[0].mxu0
  %v7798 = vadd.f32 0.0, %v7797
  %v7799 = vpop.f32.mrb[0].mxu0
  %7800 = vmatprep.mubr.f32.mxu0 0.0
  %7801 = vmatmul.mubr.f32.gmra.mrb[0].mxu0 %v7424
  %v7802 = vpop.f32.mrb[0].mxu0
  %v7803 = vadd.f32 0.0, %v7802
  %v7804 = vpop.f32.mrb[0].mxu0
  %7805 = vmatprep.mubr.f32.mxu0 0.0
  %7806 = vmatmul.mubr.f32.gmra.mrb[0].mxu0 %v7427
  %v7807 = vpop.f32.mrb[0].mxu0
  %v7808 = vadd.f32 0.0, %v7807
  %v7809 = vpop.f32.mrb[0].mxu0
  %7810 = vmatprep.mubr.f32.mxu0 0.0
  %7811 = vmatmul.mubr.f32.gmra.mrb[0].mxu0 %v7430
  %v7812 = vpop.f32.mrb[0].mxu0
  %v7813 = vadd.f32 0.0, %v7812
  %v7814 = vpop.f32.mrb[0].mxu0
  %7815 = vmatprep.mubr.f32.mxu0 0.0
  %7816 = vmatmul.mubr.f32.gmra.mrb[0].mxu0 %v7433
  %v7817 = vpop.f32.mrb[0].mxu0
  %v7818 = vadd.f32 0.0, %v7817
  %v7819 = vpop.f32.mrb[0].mxu0
  %7820 = vmatprep.mubr.f32.mxu0 0.0
  %7821 = vmatmul.mubr.f32.gmra.mrb[0].mxu0 %v7436
  %v7822 = vpop.f32.mrb[0].mxu0
  %v7823 = vadd.f32 0.0, %v7822
  %v7824 = vpop.f32.mrb[0].mxu0
  %7825 = vdwg.mxu0
  %v7827 = vsel %vm26, %v7115, 0
  %v7830 = vsel %vm26, %v7116, 0
  %v7833 = vsel %vm26, %v7117, 0
  %v7836 = vsel %vm26, %v7118, 0
  %v7839 = vsel %vm26, %v7119, 0
  %v7842 = vsel %vm26, %v7120, 0
  %v7845 = vsel %vm26, %v7121, 0
  %v7848 = vsel %vm26, %v7122, 0
  %v7851 = vsel %vm26, %v7123, 0
  %v7854 = vsel %vm26, %v7124, 0
  %v7857 = vsel %vm26, %v7125, 0
  %v7860 = vsel %vm26, %v7126, 0
  %v7863 = vsel %vm26, %v7127, 0
  %v7866 = vsel %vm26, %v7128, 0
  %v7869 = vsel %vm26, %v7129, 0
  %v7872 = vsel %vm26, %v7130, 0
  %v7875 = vsel %vm26, %v7131, 0
  %v7878 = vsel %vm26, %v7132, 0
  %v7881 = vsel %vm26, %v7133, 0
  %v7884 = vsel %vm26, %v7134, 0
  %v7887 = vsel %vm26, %v7135, 0
  %v7890 = vsel %vm26, %v7136, 0
  %v7893 = vsel %vm26, %v7137, 0
  %v7896 = vsel %vm26, %v7138, 0
  %v7899 = vsel %vm26, %v7139, 0
  %v7902 = vsel %vm26, %v7140, 0
  %v7905 = vsel %vm26, %v7141, 0
  %v7908 = vsel %vm26, %v7142, 0
  %v7911 = vsel %vm26, %v7143, 0
  %v7914 = vsel %vm26, %v7144, 0
  %v7917 = vsel %vm26, %v7145, 0
  %v7920 = vsel %vm26, %v7146, 0
  %v7923 = vsel %vm26, %v7147, 0
  %v7926 = vsel %vm26, %v7148, 0
  %v7929 = vsel %vm26, %v7149, 0
  %v7932 = vsel %vm26, %v7150, 0
  %v7935 = vsel %vm26, %v7151, 0
  %v7938 = vsel %vm26, %v7152, 0
  %v7941 = vsel %vm26, %v7153, 0
  %v7944 = vsel %vm26, %v7154, 0
  %v7947 = vsel %vm26, %v7155, 0
  %v7950 = vsel %vm26, %v7156, 0
  %v7953 = vsel %vm26, %v7157, 0
  %v7956 = vsel %vm26, %v7158, 0
  %v7959 = vsel %vm26, %v7159, 0
  %v7962 = vsel %vm26, %v7160, 0
  %v7965 = vsel %vm26, %v7161, 0
  %v7968 = vsel %vm26, %v7162, 0
  %v7971 = vsel %vm26, %v7163, 0
  %v7974 = vsel %vm26, %v7164, 0
  %v7977 = vsel %vm26, %v7165, 0
  %v7980 = vsel %vm26, %v7166, 0
  %v7983 = vsel %vm26, %v7167, 0
  %v7986 = vsel %vm26, %v7168, 0
  %v7989 = vsel %vm26, %v7169, 0
  %v7992 = vsel %vm26, %v7170, 0
  %v7995 = vsel %vm26, %v7171, 0
  %v7998 = vsel %vm26, %v7172, 0
  %v8001 = vsel %vm26, %v7173, 0
  %v8004 = vsel %vm26, %v7174, 0
  %v8007 = vsel %vm26, %v7175, 0
  %v8010 = vsel %vm26, %v7176, 0
  %v8013 = vsel %vm26, %v7177, 0
  %v8016 = vsel %vm26, %v7178, 0
  %v8019 = vsel %vm566, %v7179, 0
  %8021 = vmatprep.subr.mxu0 0.0
  %8022 = vmatpush1.msra.mxu0 %v8019
  %8023 = vmatprep.subr.mxu0 0.0
  %8024 = vmatpush1.msra.mxu0 0.0
  %8025 = vmatprep.subr.mxu0 0.0
  %8026 = vmatpush1.msra.mxu0 0.0
  %8027 = vmatprep.subr.mxu0 0.0
  %8028 = vmatpush1.msra.mxu0 0.0
  %8029 = vmatprep.subr.mxu0 0.0
  %8030 = vmatpush1.msra.mxu0 0.0
  %8031 = vmatprep.subr.mxu0 0.0
  %8032 = vmatpush1.msra.mxu0 0.0
  %8033 = vmatprep.subr.mxu0 0.0
  %8034 = vmatpush1.msra.mxu0 0.0
  %8035 = vmatprep.subr.mxu0 0.0
  %8036 = vmatpush1.msra.mxu0 0.0
  %8037 = vmatprep.subr.mxu0 0.0
  %8038 = vmatpush1.msra.mxu0 0.0
  %8039 = vmatprep.subr.mxu0 0.0
  %8040 = vmatpush1.msra.mxu0 0.0
  %8041 = vmatprep.subr.mxu0 0.0
  %8042 = vmatpush1.msra.mxu0 0.0
  %8043 = vmatprep.subr.mxu0 0.0
  %8044 = vmatpush1.msra.mxu0 0.0
  %8045 = vmatprep.subr.mxu0 0.0
  %8046 = vmatpush1.msra.mxu0 0.0
  %8047 = vmatprep.subr.mxu0 0.0
  %8048 = vmatpush1.msra.mxu0 0.0
  %8049 = vmatprep.subr.mxu0 0.0
  %8050 = vmatpush1.msra.mxu0 0.0
  %8051 = vmatprep.subr.mxu0 0.0
  %8052 = vmatpush1.msra.mxu0 0.0
  %8053 = vmatprep.subr.mxu0 0.0
  %8054 = vmatpush1.msra.mxu0 0.0
  %8055 = vmatprep.subr.mxu0 0.0
  %8056 = vmatpush1.msra.mxu0 0.0
  %8057 = vmatprep.subr.mxu0 0.0
  %8058 = vmatpush1.msra.mxu0 0.0
  %8059 = vmatprep.subr.mxu0 0.0
  %8060 = vmatpush1.msra.mxu0 0.0
  %8061 = vmatprep.subr.mxu0 0.0
  %8062 = vmatpush1.msra.mxu0 0.0
  %8063 = vmatprep.subr.mxu0 0.0
  %8064 = vmatpush1.msra.mxu0 0.0
  %8065 = vmatprep.subr.mxu0 0.0
  %8066 = vmatpush1.msra.mxu0 0.0
  %8067 = vmatprep.subr.mxu0 0.0
  %8068 = vmatpush1.msra.mxu0 0.0
  %8069 = vmatprep.subr.mxu0 0.0
  %8070 = vmatpush1.msra.mxu0 0.0
  %8071 = vmatprep.subr.mxu0 0.0
  %8072 = vmatpush1.msra.mxu0 0.0
  %8073 = vmatprep.subr.mxu0 0.0
  %8074 = vmatpush1.msra.mxu0 0.0
  %8075 = vmatprep.subr.mxu0 0.0
  %8076 = vmatpush1.msra.mxu0 0.0
  %8077 = vmatprep.subr.mxu0 0.0
  %8078 = vmatpush1.msra.mxu0 0.0
  %8079 = vmatprep.subr.mxu0 0.0
  %8080 = vmatpush1.msra.mxu0 0.0
  %8081 = vmatprep.subr.mxu0 0.0
  %8082 = vmatpush1.msra.mxu0 0.0
  %8083 = vmatprep.subr.mxu0 0.0
  %8084 = vmatpush1.msra.mxu0 0.0
  %8085 = vmatprep.mubr.f32.mxu0 0.0
  %8086 = vmatmul.mubr.f32.gmra.mrb[0].mxu0 %v7827
  %v8087 = vpop.f32.mrb[0].mxu0
  %v8088 = vadd.f32 %v7508, %v8087
  %v8089 = vpop.f32.mrb[0].mxu0
  %8090 = vmatprep.mubr.f32.mxu0 0.0
  %8091 = vmatmul.mubr.f32.gmra.mrb[0].mxu0 %v7830
  %v8092 = vpop.f32.mrb[0].mxu0
  %v8093 = vadd.f32 %v7513, %v8092
  %v8094 = vpop.f32.mrb[0].mxu0
  %8095 = vmatprep.mubr.f32.mxu0 0.0
  %8096 = vmatmul.mubr.f32.gmra.mrb[0].mxu0 %v7833
  %v8097 = vpop.f32.mrb[0].mxu0
  %v8098 = vadd.f32 %v7518, %v8097
  %v8099 = vpop.f32.mrb[0].mxu0
  %8100 = vmatprep.mubr.f32.mxu0 0.0
  %8101 = vmatmul.mubr.f32.gmra.mrb[0].mxu0 %v7836
  %v8102 = vpop.f32.mrb[0].mxu0
  %v8103 = vadd.f32 %v7523, %v8102
  %v8104 = vpop.f32.mrb[0].mxu0
  %8105 = vmatprep.mubr.f32.mxu0 0.0
  %8106 = vmatmul.mubr.f32.gmra.mrb[0].mxu0 %v7839
  %v8107 = vpop.f32.mrb[0].mxu0
  %v8108 = vadd.f32 %v7528, %v8107
  %v8109 = vpop.f32.mrb[0].mxu0
  %8110 = vmatprep.mubr.f32.mxu0 0.0
  %8111 = vmatmul.mubr.f32.gmra.mrb[0].mxu0 %v7842
  %v8112 = vpop.f32.mrb[0].mxu0
  %v8113 = vadd.f32 %v7533, %v8112
  %v8114 = vpop.f32.mrb[0].mxu0
  %8115 = vmatprep.mubr.f32.mxu0 0.0
  %8116 = vmatmul.mubr.f32.gmra.mrb[0].mxu0 %v7845
  %v8117 = vpop.f32.mrb[0].mxu0
  %v8118 = vadd.f32 %v7538, %v8117
  %v8119 = vpop.f32.mrb[0].mxu0
  %8120 = vmatprep.mubr.f32.mxu0 0.0
  %8121 = vmatmul.mubr.f32.gmra.mrb[0].mxu0 %v7848
  %v8122 = vpop.f32.mrb[0].mxu0
  %v8123 = vadd.f32 %v7543, %v8122
  %v8124 = vpop.f32.mrb[0].mxu0
  %8125 = vmatprep.mubr.f32.mxu0 0.0
  %8126 = vmatmul.mubr.f32.gmra.mrb[0].mxu0 %v7851
  %v8127 = vpop.f32.mrb[0].mxu0
  %v8128 = vadd.f32 %v7548, %v8127
  %v8129 = vpop.f32.mrb[0].mxu0
  %8130 = vmatprep.mubr.f32.mxu0 0.0
  %8131 = vmatmul.mubr.f32.gmra.mrb[0].mxu0 %v7854
  %v8132 = vpop.f32.mrb[0].mxu0
  %v8133 = vadd.f32 %v7553, %v8132
  %v8134 = vpop.f32.mrb[0].mxu0
  %8135 = vmatprep.mubr.f32.mxu0 0.0
  %8136 = vmatmul.mubr.f32.gmra.mrb[0].mxu0 %v7857
  %v8137 = vpop.f32.mrb[0].mxu0
  %v8138 = vadd.f32 %v7558, %v8137
  %v8139 = vpop.f32.mrb[0].mxu0
  %8140 = vmatprep.mubr.f32.mxu0 0.0
  %8141 = vmatmul.mubr.f32.gmra.mrb[0].mxu0 %v7860
  %v8142 = vpop.f32.mrb[0].mxu0
  %v8143 = vadd.f32 %v7563, %v8142
  %v8144 = vpop.f32.mrb[0].mxu0
  %8145 = vmatprep.mubr.f32.mxu0 0.0
  %8146 = vmatmul.mubr.f32.gmra.mrb[0].mxu0 %v7863
  %v8147 = vpop.f32.mrb[0].mxu0
  %v8148 = vadd.f32 %v7568, %v8147
  %v8149 = vpop.f32.mrb[0].mxu0
  %8150 = vmatprep.mubr.f32.mxu0 0.0
  %8151 = vmatmul.mubr.f32.gmra.mrb[0].mxu0 %v7866
  %v8152 = vpop.f32.mrb[0].mxu0
  %v8153 = vadd.f32 %v7573, %v8152
  %v8154 = vpop.f32.mrb[0].mxu0
  %8155 = vmatprep.mubr.f32.mxu0 0.0
  %8156 = vmatmul.mubr.f32.gmra.mrb[0].mxu0 %v7869
  %v8157 = vpop.f32.mrb[0].mxu0
  %v8158 = vadd.f32 %v7578, %v8157
  %v8159 = vpop.f32.mrb[0].mxu0
  %8160 = vmatprep.mubr.f32.mxu0 0.0
  %8161 = vmatmul.mubr.f32.gmra.mrb[0].mxu0 %v7872
  %v8162 = vpop.f32.mrb[0].mxu0
  %v8163 = vadd.f32 %v7583, %v8162
  %v8164 = vpop.f32.mrb[0].mxu0
  %8165 = vmatprep.mubr.f32.mxu0 0.0
  %8166 = vmatmul.mubr.f32.gmra.mrb[0].mxu0 %v7875
  %v8167 = vpop.f32.mrb[0].mxu0
  %v8168 = vadd.f32 %v7588, %v8167
  %v8169 = vpop.f32.mrb[0].mxu0
  %8170 = vmatprep.mubr.f32.mxu0 0.0
  %8171 = vmatmul.mubr.f32.gmra.mrb[0].mxu0 %v7878
  %v8172 = vpop.f32.mrb[0].mxu0
  %v8173 = vadd.f32 %v7593, %v8172
  %v8174 = vpop.f32.mrb[0].mxu0
  %8175 = vmatprep.mubr.f32.mxu0 0.0
  %8176 = vmatmul.mubr.f32.gmra.mrb[0].mxu0 %v7881
  %v8177 = vpop.f32.mrb[0].mxu0
  %v8178 = vadd.f32 %v7598, %v8177
  %v8179 = vpop.f32.mrb[0].mxu0
  %8180 = vmatprep.mubr.f32.mxu0 0.0
  %8181 = vmatmul.mubr.f32.gmra.mrb[0].mxu0 %v7884
  %v8182 = vpop.f32.mrb[0].mxu0
  %v8183 = vadd.f32 %v7603, %v8182
  %v8184 = vpop.f32.mrb[0].mxu0
  %8185 = vmatprep.mubr.f32.mxu0 0.0
  %8186 = vmatmul.mubr.f32.gmra.mrb[0].mxu0 %v7887
  %v8187 = vpop.f32.mrb[0].mxu0
  %v8188 = vadd.f32 %v7608, %v8187
  %v8189 = vpop.f32.mrb[0].mxu0
  %8190 = vmatprep.mubr.f32.mxu0 0.0
  %8191 = vmatmul.mubr.f32.gmra.mrb[0].mxu0 %v7890
  %v8192 = vpop.f32.mrb[0].mxu0
  %v8193 = vadd.f32 %v7613, %v8192
  %v8194 = vpop.f32.mrb[0].mxu0
  %8195 = vmatprep.mubr.f32.mxu0 0.0
  %8196 = vmatmul.mubr.f32.gmra.mrb[0].mxu0 %v7893
  %v8197 = vpop.f32.mrb[0].mxu0
  %v8198 = vadd.f32 %v7618, %v8197
  %v8199 = vpop.f32.mrb[0].mxu0
  %8200 = vmatprep.mubr.f32.mxu0 0.0
  %8201 = vmatmul.mubr.f32.gmra.mrb[0].mxu0 %v7896
  %v8202 = vpop.f32.mrb[0].mxu0
  %v8203 = vadd.f32 %v7623, %v8202
  %v8204 = vpop.f32.mrb[0].mxu0
  %8205 = vmatprep.mubr.f32.mxu0 0.0
  %8206 = vmatmul.mubr.f32.gmra.mrb[0].mxu0 %v7899
  %v8207 = vpop.f32.mrb[0].mxu0
  %v8208 = vadd.f32 %v7628, %v8207
  %v8209 = vpop.f32.mrb[0].mxu0
  %8210 = vmatprep.mubr.f32.mxu0 0.0
  %8211 = vmatmul.mubr.f32.gmra.mrb[0].mxu0 %v7902
  %v8212 = vpop.f32.mrb[0].mxu0
  %v8213 = vadd.f32 %v7633, %v8212
  %v8214 = vpop.f32.mrb[0].mxu0
  %8215 = vmatprep.mubr.f32.mxu0 0.0
  %8216 = vmatmul.mubr.f32.gmra.mrb[0].mxu0 %v7905
  %v8217 = vpop.f32.mrb[0].mxu0
  %v8218 = vadd.f32 %v7638, %v8217
  %v8219 = vpop.f32.mrb[0].mxu0
  %8220 = vmatprep.mubr.f32.mxu0 0.0
  %8221 = vmatmul.mubr.f32.gmra.mrb[0].mxu0 %v7908
  %v8222 = vpop.f32.mrb[0].mxu0
  %v8223 = vadd.f32 %v7643, %v8222
  %v8224 = vpop.f32.mrb[0].mxu0
  %8225 = vmatprep.mubr.f32.mxu0 0.0
  %8226 = vmatmul.mubr.f32.gmra.mrb[0].mxu0 %v7911
  %v8227 = vpop.f32.mrb[0].mxu0
  %v8228 = vadd.f32 %v7648, %v8227
  %v8229 = vpop.f32.mrb[0].mxu0
  %8230 = vmatprep.mubr.f32.mxu0 0.0
  %8231 = vmatmul.mubr.f32.gmra.mrb[0].mxu0 %v7914
  %v8232 = vpop.f32.mrb[0].mxu0
  %v8233 = vadd.f32 %v7653, %v8232
  %v8234 = vpop.f32.mrb[0].mxu0
  %8235 = vmatprep.mubr.f32.mxu0 0.0
  %8236 = vmatmul.mubr.f32.gmra.mrb[0].mxu0 %v7917
  %v8237 = vpop.f32.mrb[0].mxu0
  %v8238 = vadd.f32 %v7658, %v8237
  %v8239 = vpop.f32.mrb[0].mxu0
  %8240 = vmatprep.mubr.f32.mxu0 0.0
  %8241 = vmatmul.mubr.f32.gmra.mrb[0].mxu0 %v7920
  %v8242 = vpop.f32.mrb[0].mxu0
  %v8243 = vadd.f32 %v7663, %v8242
  %v8244 = vpop.f32.mrb[0].mxu0
  %8245 = vmatprep.mubr.f32.mxu0 0.0
  %8246 = vmatmul.mubr.f32.gmra.mrb[0].mxu0 %v7923
  %v8247 = vpop.f32.mrb[0].mxu0
  %v8248 = vadd.f32 %v7668, %v8247
  %v8249 = vpop.f32.mrb[0].mxu0
  %8250 = vmatprep.mubr.f32.mxu0 0.0
  %8251 = vmatmul.mubr.f32.gmra.mrb[0].mxu0 %v7926
  %v8252 = vpop.f32.mrb[0].mxu0
  %v8253 = vadd.f32 %v7673, %v8252
  %v8254 = vpop.f32.mrb[0].mxu0
  %8255 = vmatprep.mubr.f32.mxu0 0.0
  %8256 = vmatmul.mubr.f32.gmra.mrb[0].mxu0 %v7929
  %v8257 = vpop.f32.mrb[0].mxu0
  %v8258 = vadd.f32 %v7678, %v8257
  %v8259 = vpop.f32.mrb[0].mxu0
  %8260 = vmatprep.mubr.f32.mxu0 0.0
  %8261 = vmatmul.mubr.f32.gmra.mrb[0].mxu0 %v7932
  %v8262 = vpop.f32.mrb[0].mxu0
  %v8263 = vadd.f32 %v7683, %v8262
  %v8264 = vpop.f32.mrb[0].mxu0
  %8265 = vmatprep.mubr.f32.mxu0 0.0
  %8266 = vmatmul.mubr.f32.gmra.mrb[0].mxu0 %v7935
  %v8267 = vpop.f32.mrb[0].mxu0
  %v8268 = vadd.f32 %v7688, %v8267
  %v8269 = vpop.f32.mrb[0].mxu0
  %8270 = vmatprep.mubr.f32.mxu0 0.0
  %8271 = vmatmul.mubr.f32.gmra.mrb[0].mxu0 %v7938
  %v8272 = vpop.f32.mrb[0].mxu0
  %v8273 = vadd.f32 %v7693, %v8272
  %v8274 = vpop.f32.mrb[0].mxu0
  %8275 = vmatprep.mubr.f32.mxu0 0.0
  %8276 = vmatmul.mubr.f32.gmra.mrb[0].mxu0 %v7941
  %v8277 = vpop.f32.mrb[0].mxu0
  %v8278 = vadd.f32 %v7698, %v8277
  %v8279 = vpop.f32.mrb[0].mxu0
  %8280 = vmatprep.mubr.f32.mxu0 0.0
  %8281 = vmatmul.mubr.f32.gmra.mrb[0].mxu0 %v7944
  %v8282 = vpop.f32.mrb[0].mxu0
  %v8283 = vadd.f32 %v7703, %v8282
  %v8284 = vpop.f32.mrb[0].mxu0
  %8285 = vmatprep.mubr.f32.mxu0 0.0
  %8286 = vmatmul.mubr.f32.gmra.mrb[0].mxu0 %v7947
  %v8287 = vpop.f32.mrb[0].mxu0
  %v8288 = vadd.f32 %v7708, %v8287
  %v8289 = vpop.f32.mrb[0].mxu0
  %8290 = vmatprep.mubr.f32.mxu0 0.0
  %8291 = vmatmul.mubr.f32.gmra.mrb[0].mxu0 %v7950
  %v8292 = vpop.f32.mrb[0].mxu0
  %v8293 = vadd.f32 %v7713, %v8292
  %v8294 = vpop.f32.mrb[0].mxu0
  %8295 = vmatprep.mubr.f32.mxu0 0.0
  %8296 = vmatmul.mubr.f32.gmra.mrb[0].mxu0 %v7953
  %v8297 = vpop.f32.mrb[0].mxu0
  %v8298 = vadd.f32 %v7718, %v8297
  %v8299 = vpop.f32.mrb[0].mxu0
  %8300 = vmatprep.mubr.f32.mxu0 0.0
  %8301 = vmatmul.mubr.f32.gmra.mrb[0].mxu0 %v7956
  %v8302 = vpop.f32.mrb[0].mxu0
  %v8303 = vadd.f32 %v7723, %v8302
  %v8304 = vpop.f32.mrb[0].mxu0
  %8305 = vmatprep.mubr.f32.mxu0 0.0
  %8306 = vmatmul.mubr.f32.gmra.mrb[0].mxu0 %v7959
  %v8307 = vpop.f32.mrb[0].mxu0
  %v8308 = vadd.f32 %v7728, %v8307
  %v8309 = vpop.f32.mrb[0].mxu0
  %8310 = vmatprep.mubr.f32.mxu0 0.0
  %8311 = vmatmul.mubr.f32.gmra.mrb[0].mxu0 %v7962
  %v8312 = vpop.f32.mrb[0].mxu0
  %v8313 = vadd.f32 %v7733, %v8312
  %v8314 = vpop.f32.mrb[0].mxu0
  %8315 = vmatprep.mubr.f32.mxu0 0.0
  %8316 = vmatmul.mubr.f32.gmra.mrb[0].mxu0 %v7965
  %v8317 = vpop.f32.mrb[0].mxu0
  %v8318 = vadd.f32 %v7738, %v8317
  %v8319 = vpop.f32.mrb[0].mxu0
  %8320 = vmatprep.mubr.f32.mxu0 0.0
  %8321 = vmatmul.mubr.f32.gmra.mrb[0].mxu0 %v7968
  %v8322 = vpop.f32.mrb[0].mxu0
  %v8323 = vadd.f32 %v7743, %v8322
  %v8324 = vpop.f32.mrb[0].mxu0
  %8325 = vmatprep.mubr.f32.mxu0 0.0
  %8326 = vmatmul.mubr.f32.gmra.mrb[0].mxu0 %v7971
  %v8327 = vpop.f32.mrb[0].mxu0
  %v8328 = vadd.f32 %v7748, %v8327
  %v8329 = vpop.f32.mrb[0].mxu0
  %8330 = vmatprep.mubr.f32.mxu0 0.0
  %8331 = vmatmul.mubr.f32.gmra.mrb[0].mxu0 %v7974
  %v8332 = vpop.f32.mrb[0].mxu0
  %v8333 = vadd.f32 %v7753, %v8332
  %v8334 = vpop.f32.mrb[0].mxu0
  %8335 = vmatprep.mubr.f32.mxu0 0.0
  %8336 = vmatmul.mubr.f32.gmra.mrb[0].mxu0 %v7977
  %v8337 = vpop.f32.mrb[0].mxu0
  %v8338 = vadd.f32 %v7758, %v8337
  %v8339 = vpop.f32.mrb[0].mxu0
  %8340 = vmatprep.mubr.f32.mxu0 0.0
  %8341 = vmatmul.mubr.f32.gmra.mrb[0].mxu0 %v7980
  %v8342 = vpop.f32.mrb[0].mxu0
  %v8343 = vadd.f32 %v7763, %v8342
  %v8344 = vpop.f32.mrb[0].mxu0
  %8345 = vmatprep.mubr.f32.mxu0 0.0
  %8346 = vmatmul.mubr.f32.gmra.mrb[0].mxu0 %v7983
  %v8347 = vpop.f32.mrb[0].mxu0
  %v8348 = vadd.f32 %v7768, %v8347
  %v8349 = vpop.f32.mrb[0].mxu0
  %8350 = vmatprep.mubr.f32.mxu0 0.0
  %8351 = vmatmul.mubr.f32.gmra.mrb[0].mxu0 %v7986
  %v8352 = vpop.f32.mrb[0].mxu0
  %v8353 = vadd.f32 %v7773, %v8352
  %v8354 = vpop.f32.mrb[0].mxu0
  %8355 = vmatprep.mubr.f32.mxu0 0.0
  %8356 = vmatmul.mubr.f32.gmra.mrb[0].mxu0 %v7989
  %v8357 = vpop.f32.mrb[0].mxu0
  %v8358 = vadd.f32 %v7778, %v8357
  %v8359 = vpop.f32.mrb[0].mxu0
  %8360 = vmatprep.mubr.f32.mxu0 0.0
  %8361 = vmatmul.mubr.f32.gmra.mrb[0].mxu0 %v7992
  %v8362 = vpop.f32.mrb[0].mxu0
  %v8363 = vadd.f32 %v7783, %v8362
  %v8364 = vpop.f32.mrb[0].mxu0
  %8365 = vmatprep.mubr.f32.mxu0 0.0
  %8366 = vmatmul.mubr.f32.gmra.mrb[0].mxu0 %v7995
  %v8367 = vpop.f32.mrb[0].mxu0
  %v8368 = vadd.f32 %v7788, %v8367
  %v8369 = vpop.f32.mrb[0].mxu0
  %8370 = vmatprep.mubr.f32.mxu0 0.0
  %8371 = vmatmul.mubr.f32.gmra.mrb[0].mxu0 %v7998
  %v8372 = vpop.f32.mrb[0].mxu0
  %v8373 = vadd.f32 %v7793, %v8372
  %v8374 = vpop.f32.mrb[0].mxu0
  %8375 = vmatprep.mubr.f32.mxu0 0.0
  %8376 = vmatmul.mubr.f32.gmra.mrb[0].mxu0 %v8001
  %v8377 = vpop.f32.mrb[0].mxu0
  %v8378 = vadd.f32 %v7798, %v8377
  %v8379 = vpop.f32.mrb[0].mxu0
  %8380 = vmatprep.mubr.f32.mxu0 0.0
  %8381 = vmatmul.mubr.f32.gmra.mrb[0].mxu0 %v8004
  %v8382 = vpop.f32.mrb[0].mxu0
  %v8383 = vadd.f32 %v7803, %v8382
  %v8384 = vpop.f32.mrb[0].mxu0
  %8385 = vmatprep.mubr.f32.mxu0 0.0
  %8386 = vmatmul.mubr.f32.gmra.mrb[0].mxu0 %v8007
  %v8387 = vpop.f32.mrb[0].mxu0
  %v8388 = vadd.f32 %v7808, %v8387
  %v8389 = vpop.f32.mrb[0].mxu0
  %8390 = vmatprep.mubr.f32.mxu0 0.0
  %8391 = vmatmul.mubr.f32.gmra.mrb[0].mxu0 %v8010
  %v8392 = vpop.f32.mrb[0].mxu0
  %v8393 = vadd.f32 %v7813, %v8392
  %v8394 = vpop.f32.mrb[0].mxu0
  %8395 = vmatprep.mubr.f32.mxu0 0.0
  %8396 = vmatmul.mubr.f32.gmra.mrb[0].mxu0 %v8013
  %v8397 = vpop.f32.mrb[0].mxu0
  %v8398 = vadd.f32 %v7818, %v8397
  %v8399 = vpop.f32.mrb[0].mxu0
  %8400 = vmatprep.mubr.f32.mxu0 0.0
  %8401 = vmatmul.mubr.f32.gmra.mrb[0].mxu0 %v8016
  %v8402 = vpop.f32.mrb[0].mxu0
  %v8403 = vadd.f32 %v7823, %v8402
  %v8404 = vpop.f32.mrb[0].mxu0
  %8405 = vdwg.mxu0
  %v8406 = vld [vmem:[#allocation2 + $0x2] sm:$0xff]
  %v8407 = vld [vmem:[#allocation2 + $0xa] sm:$0xff]
  %v8408 = vld [vmem:[#allocation2 + $0x1a] sm:$0xff]
  %v8409 = vld [vmem:[#allocation2 + $0x22] sm:$0xff]
  %v8410 = vld [vmem:[#allocation2 + $0x32] sm:$0xff]
  %v8411 = vld [vmem:[#allocation2 + $0x3a] sm:$0xff]
  %v8412 = vld [vmem:[#allocation2 + $0x4a] sm:$0xff]
  %v8413 = vld [vmem:[#allocation2 + $0x52] sm:$0xff]
  %v8414 = vld [vmem:[#allocation2 + $0x62] sm:$0xff]
  %v8415 = vld [vmem:[#allocation2 + $0x6a] sm:$0xff]
  %v8416 = vld [vmem:[#allocation2 + $0x7a] sm:$0xff]
  %v8417 = vld [vmem:[#allocation2 + $0x82] sm:$0xff]
  %v8418 = vld [vmem:[#allocation2 + $0x92] sm:$0xff]
  %v8419 = vld [vmem:[#allocation2 + $0x9a] sm:$0xff]
  %v8420 = vld [vmem:[#allocation2 + $0xaa] sm:$0xff]
  %v8421 = vld [vmem:[#allocation2 + $0xb2] sm:$0xff]
  %v8422 = vld [vmem:[#allocation2 + $0xc2] sm:$0xff]
  %v8423 = vld [vmem:[#allocation2 + $0xca] sm:$0xff]
  %v8424 = vld [vmem:[#allocation2 + $0xda] sm:$0xff]
  %v8425 = vld [vmem:[#allocation2 + $0xe2] sm:$0xff]
  %v8426 = vld [vmem:[#allocation2 + $0xf2] sm:$0xff]
  %v8427 = vld [vmem:[#allocation2 + $0xfa] sm:$0xff]
  %v8428 = vld [vmem:[#allocation2 + $0x10a] sm:$0xff]
  %v8429 = vld [vmem:[#allocation2 + $0x112] sm:$0xff]
  %v8430 = vld [vmem:[#allocation2 + $0x122] sm:$0xff]
  %v8431 = vld [vmem:[#allocation2 + $0x12a] sm:$0xff]
  %v8432 = vld [vmem:[#allocation2 + $0x13a] sm:$0xff]
  %v8433 = vld [vmem:[#allocation2 + $0x142] sm:$0xff]
  %v8434 = vld [vmem:[#allocation2 + $0x152] sm:$0xff]
  %v8435 = vld [vmem:[#allocation2 + $0x15a] sm:$0xff]
  %v8436 = vld [vmem:[#allocation2 + $0x16a] sm:$0xff]
  %v8437 = vld [vmem:[#allocation2 + $0x172] sm:$0xff]
  %v8438 = vld [vmem:[#allocation2 + $0x1b2] sm:$0xff]
  %v8439 = vld [vmem:[#allocation2 + $0x1ba] sm:$0xff]
  %v8440 = vld [vmem:[#allocation2 + $0x1ca] sm:$0xff]
  %v8441 = vld [vmem:[#allocation2 + $0x1d2] sm:$0xff]
  %v8442 = vld [vmem:[#allocation2 + $0x1e2] sm:$0xff]
  %v8443 = vld [vmem:[#allocation2 + $0x1ea] sm:$0xff]
  %v8444 = vld [vmem:[#allocation2 + $0x1fa] sm:$0xff]
  %v8445 = vld [vmem:[#allocation2 + $0x202] sm:$0xff]
  %v8446 = vld [vmem:[#allocation2 + $0x212] sm:$0xff]
  %v8447 = vld [vmem:[#allocation2 + $0x21a] sm:$0xff]
  %v8448 = vld [vmem:[#allocation2 + $0x22a] sm:$0xff]
  %v8449 = vld [vmem:[#allocation2 + $0x232] sm:$0xff]
  %v8450 = vld [vmem:[#allocation2 + $0x242] sm:$0xff]
  %v8451 = vld [vmem:[#allocation2 + $0x24a] sm:$0xff]
  %v8452 = vld [vmem:[#allocation2 + $0x25a] sm:$0xff]
  %v8453 = vld [vmem:[#allocation2 + $0x262] sm:$0xff]
  %v8454 = vld [vmem:[#allocation2 + $0x272] sm:$0xff]
  %v8455 = vld [vmem:[#allocation2 + $0x27a] sm:$0xff]
  %v8456 = vld [vmem:[#allocation2 + $0x28a] sm:$0xff]
  %v8457 = vld [vmem:[#allocation2 + $0x292] sm:$0xff]
  %v8458 = vld [vmem:[#allocation2 + $0x2a2] sm:$0xff]
  %v8459 = vld [vmem:[#allocation2 + $0x2aa] sm:$0xff]
  %v8460 = vld [vmem:[#allocation2 + $0x2ba] sm:$0xff]
  %v8461 = vld [vmem:[#allocation2 + $0x2c2] sm:$0xff]
  %v8462 = vld [vmem:[#allocation2 + $0x2d2] sm:$0xff]
  %v8463 = vld [vmem:[#allocation2 + $0x2da] sm:$0xff]
  %v8464 = vld [vmem:[#allocation2 + $0x2ea] sm:$0xff]
  %v8465 = vld [vmem:[#allocation2 + $0x2f2] sm:$0xff]
  %v8466 = vld [vmem:[#allocation2 + $0x302] sm:$0xff]
  %v8467 = vld [vmem:[#allocation2 + $0x30a] sm:$0xff]
  %v8468 = vld [vmem:[#allocation2 + $0x31a] sm:$0xff]
  %v8469 = vld [vmem:[#allocation2 + $0x322] sm:$0xff]
  %s8470 = scalar_lea.vmem %s4, 8
  %v8471 = vld [vmem:[%s8470] sm:$0xf]
  %v8473 = vsel %vm26, %v8406, 0
  %v8476 = vsel %vm26, %v8407, 0
  %v8479 = vsel %vm26, %v8408, 0
  %v8482 = vsel %vm26, %v8409, 0
  %v8485 = vsel %vm26, %v8410, 0
  %v8488 = vsel %vm26, %v8411, 0
  %v8491 = vsel %vm26, %v8412, 0
  %v8494 = vsel %vm26, %v8413, 0
  %v8497 = vsel %vm26, %v8414, 0
  %v8500 = vsel %vm26, %v8415, 0
  %v8503 = vsel %vm26, %v8416, 0
  %v8506 = vsel %vm26, %v8417, 0
  %v8509 = vsel %vm26, %v8418, 0
  %v8512 = vsel %vm26, %v8419, 0
  %v8515 = vsel %vm26, %v8420, 0
  %v8518 = vsel %vm26, %v8421, 0
  %v8521 = vsel %vm26, %v8422, 0
  %v8524 = vsel %vm26, %v8423, 0
  %v8527 = vsel %vm26, %v8424, 0
  %v8530 = vsel %vm26, %v8425, 0
  %v8533 = vsel %vm26, %v8426, 0
  %v8536 = vsel %vm26, %v8427, 0
  %v8539 = vsel %vm26, %v8428, 0
  %v8542 = vsel %vm26, %v8429, 0
  %v8545 = vsel %vm26, %v8430, 0
  %v8548 = vsel %vm26, %v8431, 0
  %v8551 = vsel %vm26, %v8432, 0
  %v8554 = vsel %vm26, %v8433, 0
  %v8557 = vsel %vm26, %v8434, 0
  %v8560 = vsel %vm26, %v8435, 0
  %v8563 = vsel %vm26, %v8436, 0
  %v8566 = vsel %vm26, %v8437, 0
  %v8569 = vsel %vm26, %v8438, 0
  %v8572 = vsel %vm26, %v8439, 0
  %v8575 = vsel %vm26, %v8440, 0
  %v8578 = vsel %vm26, %v8441, 0
  %v8581 = vsel %vm26, %v8442, 0
  %v8584 = vsel %vm26, %v8443, 0
  %v8587 = vsel %vm26, %v8444, 0
  %v8590 = vsel %vm26, %v8445, 0
  %v8593 = vsel %vm26, %v8446, 0
  %v8596 = vsel %vm26, %v8447, 0
  %v8599 = vsel %vm26, %v8448, 0
  %v8602 = vsel %vm26, %v8449, 0
  %v8605 = vsel %vm26, %v8450, 0
  %v8608 = vsel %vm26, %v8451, 0
  %v8611 = vsel %vm26, %v8452, 0
  %v8614 = vsel %vm26, %v8453, 0
  %v8617 = vsel %vm26, %v8454, 0
  %v8620 = vsel %vm26, %v8455, 0
  %v8623 = vsel %vm26, %v8456, 0
  %v8626 = vsel %vm26, %v8457, 0
  %v8629 = vsel %vm26, %v8458, 0
  %v8632 = vsel %vm26, %v8459, 0
  %v8635 = vsel %vm26, %v8460, 0
  %v8638 = vsel %vm26, %v8461, 0
  %v8641 = vsel %vm26, %v8462, 0
  %v8644 = vsel %vm26, %v8463, 0
  %v8647 = vsel %vm26, %v8464, 0
  %v8650 = vsel %vm26, %v8465, 0
  %v8653 = vsel %vm26, %v8466, 0
  %v8656 = vsel %vm26, %v8467, 0
  %v8659 = vsel %vm26, %v8468, 0
  %v8662 = vsel %vm26, %v8469, 0
  %v8665 = vsel %vm566, %v8471, 0
  %8667 = vmatprep.subr.mxu0 0.0
  %8668 = vmatpush1.msra.mxu0 %v8665
  %8669 = vmatprep.subr.mxu0 0.0
  %8670 = vmatpush1.msra.mxu0 0.0
  %8671 = vmatprep.subr.mxu0 0.0
  %8672 = vmatpush1.msra.mxu0 0.0
  %8673 = vmatprep.subr.mxu0 0.0
  %8674 = vmatpush1.msra.mxu0 0.0
  %8675 = vmatprep.subr.mxu0 0.0
  %8676 = vmatpush1.msra.mxu0 0.0
  %8677 = vmatprep.subr.mxu0 0.0
  %8678 = vmatpush1.msra.mxu0 0.0
  %8679 = vmatprep.subr.mxu0 0.0
  %8680 = vmatpush1.msra.mxu0 0.0
  %8681 = vmatprep.subr.mxu0 0.0
  %8682 = vmatpush1.msra.mxu0 0.0
  %8683 = vmatprep.subr.mxu0 0.0
  %8684 = vmatpush1.msra.mxu0 0.0
  %8685 = vmatprep.subr.mxu0 0.0
  %8686 = vmatpush1.msra.mxu0 0.0
  %8687 = vmatprep.subr.mxu0 0.0
  %8688 = vmatpush1.msra.mxu0 0.0
  %8689 = vmatprep.subr.mxu0 0.0
  %8690 = vmatpush1.msra.mxu0 0.0
  %8691 = vmatprep.subr.mxu0 0.0
  %8692 = vmatpush1.msra.mxu0 0.0
  %8693 = vmatprep.subr.mxu0 0.0
  %8694 = vmatpush1.msra.mxu0 0.0
  %8695 = vmatprep.subr.mxu0 0.0
  %8696 = vmatpush1.msra.mxu0 0.0
  %8697 = vmatprep.subr.mxu0 0.0
  %8698 = vmatpush1.msra.mxu0 0.0
  %8699 = vmatprep.subr.mxu0 0.0
  %8700 = vmatpush1.msra.mxu0 0.0
  %8701 = vmatprep.subr.mxu0 0.0
  %8702 = vmatpush1.msra.mxu0 0.0
  %8703 = vmatprep.subr.mxu0 0.0
  %8704 = vmatpush1.msra.mxu0 0.0
  %8705 = vmatprep.subr.mxu0 0.0
  %8706 = vmatpush1.msra.mxu0 0.0
  %8707 = vmatprep.subr.mxu0 0.0
  %8708 = vmatpush1.msra.mxu0 0.0
  %8709 = vmatprep.subr.mxu0 0.0
  %8710 = vmatpush1.msra.mxu0 0.0
  %8711 = vmatprep.subr.mxu0 0.0
  %8712 = vmatpush1.msra.mxu0 0.0
  %8713 = vmatprep.subr.mxu0 0.0
  %8714 = vmatpush1.msra.mxu0 0.0
  %8715 = vmatprep.subr.mxu0 0.0
  %8716 = vmatpush1.msra.mxu0 0.0
  %8717 = vmatprep.subr.mxu0 0.0
  %8718 = vmatpush1.msra.mxu0 0.0
  %8719 = vmatprep.subr.mxu0 0.0
  %8720 = vmatpush1.msra.mxu0 0.0
  %8721 = vmatprep.subr.mxu0 0.0
  %8722 = vmatpush1.msra.mxu0 0.0
  %8723 = vmatprep.subr.mxu0 0.0
  %8724 = vmatpush1.msra.mxu0 0.0
  %8725 = vmatprep.subr.mxu0 0.0
  %8726 = vmatpush1.msra.mxu0 0.0
  %8727 = vmatprep.subr.mxu0 0.0
  %8728 = vmatpush1.msra.mxu0 0.0
  %8729 = vmatprep.subr.mxu0 0.0
  %8730 = vmatpush1.msra.mxu0 0.0
  %8731 = vmatprep.mubr.f32.mxu0 0.0
  %8732 = vmatmul.mubr.f32.gmra.mrb[0].mxu0 %v8473
  %v8733 = vpop.f32.mrb[0].mxu0
  %v8734 = vadd.f32 0.0, %v8733
  %v8735 = vpop.f32.mrb[0].mxu0
  %8736 = vmatprep.mubr.f32.mxu0 0.0
  %8737 = vmatmul.mubr.f32.gmra.mrb[0].mxu0 %v8476
  %v8738 = vpop.f32.mrb[0].mxu0
  %v8739 = vadd.f32 0.0, %v8738
  %v8740 = vpop.f32.mrb[0].mxu0
  %8741 = vmatprep.mubr.f32.mxu0 0.0
  %8742 = vmatmul.mubr.f32.gmra.mrb[0].mxu0 %v8479
  %v8743 = vpop.f32.mrb[0].mxu0
  %v8744 = vadd.f32 0.0, %v8743
  %v8745 = vpop.f32.mrb[0].mxu0
  %8746 = vmatprep.mubr.f32.mxu0 0.0
  %8747 = vmatmul.mubr.f32.gmra.mrb[0].mxu0 %v8482
  %v8748 = vpop.f32.mrb[0].mxu0
  %v8749 = vadd.f32 0.0, %v8748
  %v8750 = vpop.f32.mrb[0].mxu0
  %8751 = vmatprep.mubr.f32.mxu0 0.0
  %8752 = vmatmul.mubr.f32.gmra.mrb[0].mxu0 %v8485
  %v8753 = vpop.f32.mrb[0].mxu0
  %v8754 = vadd.f32 0.0, %v8753
  %v8755 = vpop.f32.mrb[0].mxu0
  %8756 = vmatprep.mubr.f32.mxu0 0.0
  %8757 = vmatmul.mubr.f32.gmra.mrb[0].mxu0 %v8488
  %v8758 = vpop.f32.mrb[0].mxu0
  %v8759 = vadd.f32 0.0, %v8758
  %v8760 = vpop.f32.mrb[0].mxu0
  %8761 = vmatprep.mubr.f32.mxu0 0.0
  %8762 = vmatmul.mubr.f32.gmra.mrb[0].mxu0 %v8491
  %v8763 = vpop.f32.mrb[0].mxu0
  %v8764 = vadd.f32 0.0, %v8763
  %v8765 = vpop.f32.mrb[0].mxu0
  %8766 = vmatprep.mubr.f32.mxu0 0.0
  %8767 = vmatmul.mubr.f32.gmra.mrb[0].mxu0 %v8494
  %v8768 = vpop.f32.mrb[0].mxu0
  %v8769 = vadd.f32 0.0, %v8768
  %v8770 = vpop.f32.mrb[0].mxu0
  %8771 = vmatprep.mubr.f32.mxu0 0.0
  %8772 = vmatmul.mubr.f32.gmra.mrb[0].mxu0 %v8497
  %v8773 = vpop.f32.mrb[0].mxu0
  %v8774 = vadd.f32 0.0, %v8773
  %v8775 = vpop.f32.mrb[0].mxu0
  %8776 = vmatprep.mubr.f32.mxu0 0.0
  %8777 = vmatmul.mubr.f32.gmra.mrb[0].mxu0 %v8500
  %v8778 = vpop.f32.mrb[0].mxu0
  %v8779 = vadd.f32 0.0, %v8778
  %v8780 = vpop.f32.mrb[0].mxu0
  %8781 = vmatprep.mubr.f32.mxu0 0.0
  %8782 = vmatmul.mubr.f32.gmra.mrb[0].mxu0 %v8503
  %v8783 = vpop.f32.mrb[0].mxu0
  %v8784 = vadd.f32 0.0, %v8783
  %v8785 = vpop.f32.mrb[0].mxu0
  %8786 = vmatprep.mubr.f32.mxu0 0.0
  %8787 = vmatmul.mubr.f32.gmra.mrb[0].mxu0 %v8506
  %v8788 = vpop.f32.mrb[0].mxu0
  %v8789 = vadd.f32 0.0, %v8788
  %v8790 = vpop.f32.mrb[0].mxu0
  %8791 = vmatprep.mubr.f32.mxu0 0.0
  %8792 = vmatmul.mubr.f32.gmra.mrb[0].mxu0 %v8509
  %v8793 = vpop.f32.mrb[0].mxu0
  %v8794 = vadd.f32 0.0, %v8793
  %v8795 = vpop.f32.mrb[0].mxu0
  %8796 = vmatprep.mubr.f32.mxu0 0.0
  %8797 = vmatmul.mubr.f32.gmra.mrb[0].mxu0 %v8512
  %v8798 = vpop.f32.mrb[0].mxu0
  %v8799 = vadd.f32 0.0, %v8798
  %v8800 = vpop.f32.mrb[0].mxu0
  %8801 = vmatprep.mubr.f32.mxu0 0.0
  %8802 = vmatmul.mubr.f32.gmra.mrb[0].mxu0 %v8515
  %v8803 = vpop.f32.mrb[0].mxu0
  %v8804 = vadd.f32 0.0, %v8803
  %v8805 = vpop.f32.mrb[0].mxu0
  %8806 = vmatprep.mubr.f32.mxu0 0.0
  %8807 = vmatmul.mubr.f32.gmra.mrb[0].mxu0 %v8518
  %v8808 = vpop.f32.mrb[0].mxu0
  %v8809 = vadd.f32 0.0, %v8808
  %v8810 = vpop.f32.mrb[0].mxu0
  %8811 = vmatprep.mubr.f32.mxu0 0.0
  %8812 = vmatmul.mubr.f32.gmra.mrb[0].mxu0 %v8521
  %v8813 = vpop.f32.mrb[0].mxu0
  %v8814 = vadd.f32 0.0, %v8813
  %v8815 = vpop.f32.mrb[0].mxu0
  %8816 = vmatprep.mubr.f32.mxu0 0.0
  %8817 = vmatmul.mubr.f32.gmra.mrb[0].mxu0 %v8524
  %v8818 = vpop.f32.mrb[0].mxu0
  %v8819 = vadd.f32 0.0, %v8818
  %v8820 = vpop.f32.mrb[0].mxu0
  %8821 = vmatprep.mubr.f32.mxu0 0.0
  %8822 = vmatmul.mubr.f32.gmra.mrb[0].mxu0 %v8527
  %v8823 = vpop.f32.mrb[0].mxu0
  %v8824 = vadd.f32 0.0, %v8823
  %v8825 = vpop.f32.mrb[0].mxu0
  %8826 = vmatprep.mubr.f32.mxu0 0.0
  %8827 = vmatmul.mubr.f32.gmra.mrb[0].mxu0 %v8530
  %v8828 = vpop.f32.mrb[0].mxu0
  %v8829 = vadd.f32 0.0, %v8828
  %v8830 = vpop.f32.mrb[0].mxu0
  %8831 = vmatprep.mubr.f32.mxu0 0.0
  %8832 = vmatmul.mubr.f32.gmra.mrb[0].mxu0 %v8533
  %v8833 = vpop.f32.mrb[0].mxu0
  %v8834 = vadd.f32 0.0, %v8833
  %v8835 = vpop.f32.mrb[0].mxu0
  %8836 = vmatprep.mubr.f32.mxu0 0.0
  %8837 = vmatmul.mubr.f32.gmra.mrb[0].mxu0 %v8536
  %v8838 = vpop.f32.mrb[0].mxu0
  %v8839 = vadd.f32 0.0, %v8838
  %v8840 = vpop.f32.mrb[0].mxu0
  %8841 = vmatprep.mubr.f32.mxu0 0.0
  %8842 = vmatmul.mubr.f32.gmra.mrb[0].mxu0 %v8539
  %v8843 = vpop.f32.mrb[0].mxu0
  %v8844 = vadd.f32 0.0, %v8843
  %v8845 = vpop.f32.mrb[0].mxu0
  %8846 = vmatprep.mubr.f32.mxu0 0.0
  %8847 = vmatmul.mubr.f32.gmra.mrb[0].mxu0 %v8542
  %v8848 = vpop.f32.mrb[0].mxu0
  %v8849 = vadd.f32 0.0, %v8848
  %v8850 = vpop.f32.mrb[0].mxu0
  %8851 = vmatprep.mubr.f32.mxu0 0.0
  %8852 = vmatmul.mubr.f32.gmra.mrb[0].mxu0 %v8545
  %v8853 = vpop.f32.mrb[0].mxu0
  %v8854 = vadd.f32 0.0, %v8853
  %v8855 = vpop.f32.mrb[0].mxu0
  %8856 = vmatprep.mubr.f32.mxu0 0.0
  %8857 = vmatmul.mubr.f32.gmra.mrb[0].mxu0 %v8548
  %v8858 = vpop.f32.mrb[0].mxu0
  %v8859 = vadd.f32 0.0, %v8858
  %v8860 = vpop.f32.mrb[0].mxu0
  %8861 = vmatprep.mubr.f32.mxu0 0.0
  %8862 = vmatmul.mubr.f32.gmra.mrb[0].mxu0 %v8551
  %v8863 = vpop.f32.mrb[0].mxu0
  %v8864 = vadd.f32 0.0, %v8863
  %v8865 = vpop.f32.mrb[0].mxu0
  %8866 = vmatprep.mubr.f32.mxu0 0.0
  %8867 = vmatmul.mubr.f32.gmra.mrb[0].mxu0 %v8554
  %v8868 = vpop.f32.mrb[0].mxu0
  %v8869 = vadd.f32 0.0, %v8868
  %v8870 = vpop.f32.mrb[0].mxu0
  %8871 = vmatprep.mubr.f32.mxu0 0.0
  %8872 = vmatmul.mubr.f32.gmra.mrb[0].mxu0 %v8557
  %v8873 = vpop.f32.mrb[0].mxu0
  %v8874 = vadd.f32 0.0, %v8873
  %v8875 = vpop.f32.mrb[0].mxu0
  %8876 = vmatprep.mubr.f32.mxu0 0.0
  %8877 = vmatmul.mubr.f32.gmra.mrb[0].mxu0 %v8560
  %v8878 = vpop.f32.mrb[0].mxu0
  %v8879 = vadd.f32 0.0, %v8878
  %v8880 = vpop.f32.mrb[0].mxu0
  %8881 = vmatprep.mubr.f32.mxu0 0.0
  %8882 = vmatmul.mubr.f32.gmra.mrb[0].mxu0 %v8563
  %v8883 = vpop.f32.mrb[0].mxu0
  %v8884 = vadd.f32 0.0, %v8883
  %v8885 = vpop.f32.mrb[0].mxu0
  %8886 = vmatprep.mubr.f32.mxu0 0.0
  %8887 = vmatmul.mubr.f32.gmra.mrb[0].mxu0 %v8566
  %v8888 = vpop.f32.mrb[0].mxu0
  %v8889 = vadd.f32 0.0, %v8888
  %v8890 = vpop.f32.mrb[0].mxu0
  %8891 = vmatprep.mubr.f32.mxu0 0.0
  %8892 = vmatmul.mubr.f32.gmra.mrb[0].mxu0 %v8569
  %v8893 = vpop.f32.mrb[0].mxu0
  %v8894 = vadd.f32 0.0, %v8893
  %v8895 = vpop.f32.mrb[0].mxu0
  %8896 = vmatprep.mubr.f32.mxu0 0.0
  %8897 = vmatmul.mubr.f32.gmra.mrb[0].mxu0 %v8572
  %v8898 = vpop.f32.mrb[0].mxu0
  %v8899 = vadd.f32 0.0, %v8898
  %v8900 = vpop.f32.mrb[0].mxu0
  %8901 = vmatprep.mubr.f32.mxu0 0.0
  %8902 = vmatmul.mubr.f32.gmra.mrb[0].mxu0 %v8575
  %v8903 = vpop.f32.mrb[0].mxu0
  %v8904 = vadd.f32 0.0, %v8903
  %v8905 = vpop.f32.mrb[0].mxu0
  %8906 = vmatprep.mubr.f32.mxu0 0.0
  %8907 = vmatmul.mubr.f32.gmra.mrb[0].mxu0 %v8578
  %v8908 = vpop.f32.mrb[0].mxu0
  %v8909 = vadd.f32 0.0, %v8908
  %v8910 = vpop.f32.mrb[0].mxu0
  %8911 = vmatprep.mubr.f32.mxu0 0.0
  %8912 = vmatmul.mubr.f32.gmra.mrb[0].mxu0 %v8581
  %v8913 = vpop.f32.mrb[0].mxu0
  %v8914 = vadd.f32 0.0, %v8913
  %v8915 = vpop.f32.mrb[0].mxu0
  %8916 = vmatprep.mubr.f32.mxu0 0.0
  %8917 = vmatmul.mubr.f32.gmra.mrb[0].mxu0 %v8584
  %v8918 = vpop.f32.mrb[0].mxu0
  %v8919 = vadd.f32 0.0, %v8918
  %v8920 = vpop.f32.mrb[0].mxu0
  %8921 = vmatprep.mubr.f32.mxu0 0.0
  %8922 = vmatmul.mubr.f32.gmra.mrb[0].mxu0 %v8587
  %v8923 = vpop.f32.mrb[0].mxu0
  %v8924 = vadd.f32 0.0, %v8923
  %v8925 = vpop.f32.mrb[0].mxu0
  %8926 = vmatprep.mubr.f32.mxu0 0.0
  %8927 = vmatmul.mubr.f32.gmra.mrb[0].mxu0 %v8590
  %v8928 = vpop.f32.mrb[0].mxu0
  %v8929 = vadd.f32 0.0, %v8928
  %v8930 = vpop.f32.mrb[0].mxu0
  %8931 = vmatprep.mubr.f32.mxu0 0.0
  %8932 = vmatmul.mubr.f32.gmra.mrb[0].mxu0 %v8593
  %v8933 = vpop.f32.mrb[0].mxu0
  %v8934 = vadd.f32 0.0, %v8933
  %v8935 = vpop.f32.mrb[0].mxu0
  %8936 = vmatprep.mubr.f32.mxu0 0.0
  %8937 = vmatmul.mubr.f32.gmra.mrb[0].mxu0 %v8596
  %v8938 = vpop.f32.mrb[0].mxu0
  %v8939 = vadd.f32 0.0, %v8938
  %v8940 = vpop.f32.mrb[0].mxu0
  %8941 = vmatprep.mubr.f32.mxu0 0.0
  %8942 = vmatmul.mubr.f32.gmra.mrb[0].mxu0 %v8599
  %v8943 = vpop.f32.mrb[0].mxu0
  %v8944 = vadd.f32 0.0, %v8943
  %v8945 = vpop.f32.mrb[0].mxu0
  %8946 = vmatprep.mubr.f32.mxu0 0.0
  %8947 = vmatmul.mubr.f32.gmra.mrb[0].mxu0 %v8602
  %v8948 = vpop.f32.mrb[0].mxu0
  %v8949 = vadd.f32 0.0, %v8948
  %v8950 = vpop.f32.mrb[0].mxu0
  %8951 = vmatprep.mubr.f32.mxu0 0.0
  %8952 = vmatmul.mubr.f32.gmra.mrb[0].mxu0 %v8605
  %v8953 = vpop.f32.mrb[0].mxu0
  %v8954 = vadd.f32 0.0, %v8953
  %v8955 = vpop.f32.mrb[0].mxu0
  %8956 = vmatprep.mubr.f32.mxu0 0.0
  %8957 = vmatmul.mubr.f32.gmra.mrb[0].mxu0 %v8608
  %v8958 = vpop.f32.mrb[0].mxu0
  %v8959 = vadd.f32 0.0, %v8958
  %v8960 = vpop.f32.mrb[0].mxu0
  %8961 = vmatprep.mubr.f32.mxu0 0.0
  %8962 = vmatmul.mubr.f32.gmra.mrb[0].mxu0 %v8611
  %v8963 = vpop.f32.mrb[0].mxu0
  %v8964 = vadd.f32 0.0, %v8963
  %v8965 = vpop.f32.mrb[0].mxu0
  %8966 = vmatprep.mubr.f32.mxu0 0.0
  %8967 = vmatmul.mubr.f32.gmra.mrb[0].mxu0 %v8614
  %v8968 = vpop.f32.mrb[0].mxu0
  %v8969 = vadd.f32 0.0, %v8968
  %v8970 = vpop.f32.mrb[0].mxu0
  %8971 = vmatprep.mubr.f32.mxu0 0.0
  %8972 = vmatmul.mubr.f32.gmra.mrb[0].mxu0 %v8617
  %v8973 = vpop.f32.mrb[0].mxu0
  %v8974 = vadd.f32 0.0, %v8973
  %v8975 = vpop.f32.mrb[0].mxu0
  %8976 = vmatprep.mubr.f32.mxu0 0.0
  %8977 = vmatmul.mubr.f32.gmra.mrb[0].mxu0 %v8620
  %v8978 = vpop.f32.mrb[0].mxu0
  %v8979 = vadd.f32 0.0, %v8978
  %v8980 = vpop.f32.mrb[0].mxu0
  %8981 = vmatprep.mubr.f32.mxu0 0.0
  %8982 = vmatmul.mubr.f32.gmra.mrb[0].mxu0 %v8623
  %v8983 = vpop.f32.mrb[0].mxu0
  %v8984 = vadd.f32 0.0, %v8983
  %v8985 = vpop.f32.mrb[0].mxu0
  %8986 = vmatprep.mubr.f32.mxu0 0.0
  %8987 = vmatmul.mubr.f32.gmra.mrb[0].mxu0 %v8626
  %v8988 = vpop.f32.mrb[0].mxu0
  %v8989 = vadd.f32 0.0, %v8988
  %v8990 = vpop.f32.mrb[0].mxu0
  %8991 = vmatprep.mubr.f32.mxu0 0.0
  %8992 = vmatmul.mubr.f32.gmra.mrb[0].mxu0 %v8629
  %v8993 = vpop.f32.mrb[0].mxu0
  %v8994 = vadd.f32 0.0, %v8993
  %v8995 = vpop.f32.mrb[0].mxu0
  %8996 = vmatprep.mubr.f32.mxu0 0.0
  %8997 = vmatmul.mubr.f32.gmra.mrb[0].mxu0 %v8632
  %v8998 = vpop.f32.mrb[0].mxu0
  %v8999 = vadd.f32 0.0, %v8998
  %v9000 = vpop.f32.mrb[0].mxu0
  %9001 = vmatprep.mubr.f32.mxu0 0.0
  %9002 = vmatmul.mubr.f32.gmra.mrb[0].mxu0 %v8635
  %v9003 = vpop.f32.mrb[0].mxu0
  %v9004 = vadd.f32 0.0, %v9003
  %v9005 = vpop.f32.mrb[0].mxu0
  %9006 = vmatprep.mubr.f32.mxu0 0.0
  %9007 = vmatmul.mubr.f32.gmra.mrb[0].mxu0 %v8638
  %v9008 = vpop.f32.mrb[0].mxu0
  %v9009 = vadd.f32 0.0, %v9008
  %v9010 = vpop.f32.mrb[0].mxu0
  %9011 = vmatprep.mubr.f32.mxu0 0.0
  %9012 = vmatmul.mubr.f32.gmra.mrb[0].mxu0 %v8641
  %v9013 = vpop.f32.mrb[0].mxu0
  %v9014 = vadd.f32 0.0, %v9013
  %v9015 = vpop.f32.mrb[0].mxu0
  %9016 = vmatprep.mubr.f32.mxu0 0.0
  %9017 = vmatmul.mubr.f32.gmra.mrb[0].mxu0 %v8644
  %v9018 = vpop.f32.mrb[0].mxu0
  %v9019 = vadd.f32 0.0, %v9018
  %v9020 = vpop.f32.mrb[0].mxu0
  %9021 = vmatprep.mubr.f32.mxu0 0.0
  %9022 = vmatmul.mubr.f32.gmra.mrb[0].mxu0 %v8647
  %v9023 = vpop.f32.mrb[0].mxu0
  %v9024 = vadd.f32 0.0, %v9023
  %v9025 = vpop.f32.mrb[0].mxu0
  %9026 = vmatprep.mubr.f32.mxu0 0.0
  %9027 = vmatmul.mubr.f32.gmra.mrb[0].mxu0 %v8650
  %v9028 = vpop.f32.mrb[0].mxu0
  %v9029 = vadd.f32 0.0, %v9028
  %v9030 = vpop.f32.mrb[0].mxu0
  %9031 = vmatprep.mubr.f32.mxu0 0.0
  %9032 = vmatmul.mubr.f32.gmra.mrb[0].mxu0 %v8653
  %v9033 = vpop.f32.mrb[0].mxu0
  %v9034 = vadd.f32 0.0, %v9033
  %v9035 = vpop.f32.mrb[0].mxu0
  %9036 = vmatprep.mubr.f32.mxu0 0.0
  %9037 = vmatmul.mubr.f32.gmra.mrb[0].mxu0 %v8656
  %v9038 = vpop.f32.mrb[0].mxu0
  %v9039 = vadd.f32 0.0, %v9038
  %v9040 = vpop.f32.mrb[0].mxu0
  %9041 = vmatprep.mubr.f32.mxu0 0.0
  %9042 = vmatmul.mubr.f32.gmra.mrb[0].mxu0 %v8659
  %v9043 = vpop.f32.mrb[0].mxu0
  %v9044 = vadd.f32 0.0, %v9043
  %v9045 = vpop.f32.mrb[0].mxu0
  %9046 = vmatprep.mubr.f32.mxu0 0.0
  %9047 = vmatmul.mubr.f32.gmra.mrb[0].mxu0 %v8662
  %v9048 = vpop.f32.mrb[0].mxu0
  %v9049 = vadd.f32 0.0, %v9048
  %v9050 = vpop.f32.mrb[0].mxu0
  %9051 = vdwg.mxu0
  %v9052 = vadd.f32 %v8088, %v8734
  %v9053 = vadd.f32 %v8093, %v8739
  %v9054 = vadd.f32 %v8098, %v8744
  %v9055 = vadd.f32 %v8103, %v8749
  %v9056 = vadd.f32 %v8108, %v8754
  %v9057 = vadd.f32 %v8113, %v8759
  %v9058 = vadd.f32 %v8118, %v8764
  %v9059 = vadd.f32 %v8123, %v8769
  %v9060 = vadd.f32 %v8128, %v8774
  %v9061 = vadd.f32 %v8133, %v8779
  %v9062 = vadd.f32 %v8138, %v8784
  %v9063 = vadd.f32 %v8143, %v8789
  %v9064 = vadd.f32 %v8148, %v8794
  %v9065 = vadd.f32 %v8153, %v8799
  %v9066 = vadd.f32 %v8158, %v8804
  %v9067 = vadd.f32 %v8163, %v8809
  %v9068 = vadd.f32 %v8168, %v8814
  %v9069 = vadd.f32 %v8173, %v8819
  %v9070 = vadd.f32 %v8178, %v8824
  %v9071 = vadd.f32 %v8183, %v8829
  %v9072 = vadd.f32 %v8188, %v8834
  %v9073 = vadd.f32 %v8193, %v8839
  %v9074 = vadd.f32 %v8198, %v8844
  %v9075 = vadd.f32 %v8203, %v8849
  %v9076 = vadd.f32 %v8208, %v8854
  %v9077 = vadd.f32 %v8213, %v8859
  %v9078 = vadd.f32 %v8218, %v8864
  %v9079 = vadd.f32 %v8223, %v8869
  %v9080 = vadd.f32 %v8228, %v8874
  %v9081 = vadd.f32 %v8233, %v8879
  %v9082 = vadd.f32 %v8238, %v8884
  %v9083 = vadd.f32 %v8243, %v8889
  %v9084 = vadd.f32 %v8248, %v8894
  %v9085 = vadd.f32 %v8253, %v8899
  %v9086 = vadd.f32 %v8258, %v8904
  %v9087 = vadd.f32 %v8263, %v8909
  %v9088 = vadd.f32 %v8268, %v8914
  %v9089 = vadd.f32 %v8273, %v8919
  %v9090 = vadd.f32 %v8278, %v8924
  %v9091 = vadd.f32 %v8283, %v8929
  %v9092 = vadd.f32 %v8288, %v8934
  %v9093 = vadd.f32 %v8293, %v8939
  %v9094 = vadd.f32 %v8298, %v8944
  %v9095 = vadd.f32 %v8303, %v8949
  %v9096 = vadd.f32 %v8308, %v8954
  %v9097 = vadd.f32 %v8313, %v8959
  %v9098 = vadd.f32 %v8318, %v8964
  %v9099 = vadd.f32 %v8323, %v8969
  %v9100 = vadd.f32 %v8328, %v8974
  %v9101 = vadd.f32 %v8333, %v8979
  %v9102 = vadd.f32 %v8338, %v8984
  %v9103 = vadd.f32 %v8343, %v8989
  %v9104 = vadd.f32 %v8348, %v8994
  %v9105 = vadd.f32 %v8353, %v8999
  %v9106 = vadd.f32 %v8358, %v9004
  %v9107 = vadd.f32 %v8363, %v9009
  %v9108 = vadd.f32 %v8368, %v9014
  %v9109 = vadd.f32 %v8373, %v9019
  %v9110 = vadd.f32 %v8378, %v9024
  %v9111 = vadd.f32 %v8383, %v9029
  %v9112 = vadd.f32 %v8388, %v9034
  %v9113 = vadd.f32 %v8393, %v9039
  %v9114 = vadd.f32 %v8398, %v9044
  %v9115 = vadd.f32 %v8403, %v9049
  %v9116 = vld [vmem:[%s178] sm:$0xff]
  %v9117 = vld [vmem:[%s178 + $0x8] sm:$0xff]
  %v9118 = vld [vmem:[%s178 + $0x18] sm:$0xff]
  %v9119 = vld [vmem:[%s178 + $0x20] sm:$0xff]
  %v9120 = vld [vmem:[%s178 + $0x30] sm:$0xff]
  %v9121 = vld [vmem:[%s178 + $0x38] sm:$0xff]
  %v9122 = vld [vmem:[%s178 + $0x48] sm:$0xff]
  %v9123 = vld [vmem:[%s178 + $0x50] sm:$0xff]
  %v9124 = vld [vmem:[%s178 + $0x60] sm:$0xff]
  %v9125 = vld [vmem:[%s178 + $0x68] sm:$0xff]
  %v9126 = vld [vmem:[%s178 + $0x78] sm:$0xff]
  %v9127 = vld [vmem:[%s178 + $0x80] sm:$0xff]
  %v9128 = vld [vmem:[%s178 + $0x90] sm:$0xff]
  %v9129 = vld [vmem:[%s178 + $0x98] sm:$0xff]
  %v9130 = vld [vmem:[%s178 + $0xa8] sm:$0xff]
  %v9131 = vld [vmem:[%s178 + $0xb0] sm:$0xff]
  %v9132 = vld [vmem:[%s178 + $0xc0] sm:$0xff]
  %v9133 = vld [vmem:[%s178 + $0xc8] sm:$0xff]
  %v9134 = vld [vmem:[%s178 + $0xd8] sm:$0xff]
  %v9135 = vld [vmem:[%s178 + $0xe0] sm:$0xff]
  %v9136 = vld [vmem:[%s178 + $0xf0] sm:$0xff]
  %v9137 = vld [vmem:[%s178 + $0xf8] sm:$0xff]
  %v9138 = vld [vmem:[%s178 + $0x108] sm:$0xff]
  %v9139 = vld [vmem:[%s178 + $0x110] sm:$0xff]
  %v9140 = vld [vmem:[%s178 + $0x120] sm:$0xff]
  %v9141 = vld [vmem:[%s178 + $0x128] sm:$0xff]
  %v9142 = vld [vmem:[%s178 + $0x138] sm:$0xff]
  %v9143 = vld [vmem:[%s178 + $0x140] sm:$0xff]
  %v9144 = vld [vmem:[%s178 + $0x150] sm:$0xff]
  %v9145 = vld [vmem:[%s178 + $0x158] sm:$0xff]
  %v9146 = vld [vmem:[%s178 + $0x168] sm:$0xff]
  %v9147 = vld [vmem:[%s178 + $0x170] sm:$0xff]
  %v9148 = vld [vmem:[%s178 + $0x1b0] sm:$0xff]
  %v9149 = vld [vmem:[%s178 + $0x1b8] sm:$0xff]
  %v9150 = vld [vmem:[%s178 + $0x1c8] sm:$0xff]
  %v9151 = vld [vmem:[%s178 + $0x1d0] sm:$0xff]
  %v9152 = vld [vmem:[%s178 + $0x1e0] sm:$0xff]
  %v9153 = vld [vmem:[%s178 + $0x1e8] sm:$0xff]
  %v9154 = vld [vmem:[%s178 + $0x1f8] sm:$0xff]
  %v9155 = vld [vmem:[%s178 + $0x200] sm:$0xff]
  %v9156 = vld [vmem:[%s178 + $0x210] sm:$0xff]
  %v9157 = vld [vmem:[%s178 + $0x218] sm:$0xff]
  %v9158 = vld [vmem:[%s178 + $0x228] sm:$0xff]
  %v9159 = vld [vmem:[%s178 + $0x230] sm:$0xff]
  %v9160 = vld [vmem:[%s178 + $0x240] sm:$0xff]
  %v9161 = vld [vmem:[%s178 + $0x248] sm:$0xff]
  %v9162 = vld [vmem:[%s178 + $0x258] sm:$0xff]
  %v9163 = vld [vmem:[%s178 + $0x260] sm:$0xff]
  %v9164 = vld [vmem:[%s178 + $0x270] sm:$0xff]
  %v9165 = vld [vmem:[%s178 + $0x278] sm:$0xff]
  %v9166 = vld [vmem:[%s178 + $0x288] sm:$0xff]
  %v9167 = vld [vmem:[%s178 + $0x290] sm:$0xff]
  %v9168 = vld [vmem:[%s178 + $0x2a0] sm:$0xff]
  %v9169 = vld [vmem:[%s178 + $0x2a8] sm:$0xff]
  %v9170 = vld [vmem:[%s178 + $0x2b8] sm:$0xff]
  %v9171 = vld [vmem:[%s178 + $0x2c0] sm:$0xff]
  %v9172 = vld [vmem:[%s178 + $0x2d0] sm:$0xff]
  %v9173 = vld [vmem:[%s178 + $0x2d8] sm:$0xff]
  %v9174 = vld [vmem:[%s178 + $0x2e8] sm:$0xff]
  %v9175 = vld [vmem:[%s178 + $0x2f0] sm:$0xff]
  %v9176 = vld [vmem:[%s178 + $0x300] sm:$0xff]
  %v9177 = vld [vmem:[%s178 + $0x308] sm:$0xff]
  %v9178 = vld [vmem:[%s178 + $0x318] sm:$0xff]
  %v9179 = vld [vmem:[%s178 + $0x320] sm:$0xff]
  %s9180 = scalar_lea.vmem %s4, 12
  %v9181 = vld [vmem:[%s9180] sm:$0xf]
  %v9183 = vsel %vm26, %v9116, 0
  %v9186 = vsel %vm26, %v9117, 0
  %v9189 = vsel %vm26, %v9118, 0
  %v9192 = vsel %vm26, %v9119, 0
  %v9195 = vsel %vm26, %v9120, 0
  %v9198 = vsel %vm26, %v9121, 0
  %v9201 = vsel %vm26, %v9122, 0
  %v9204 = vsel %vm26, %v9123, 0
  %v9207 = vsel %vm26, %v9124, 0
  %v9210 = vsel %vm26, %v9125, 0
  %v9213 = vsel %vm26, %v9126, 0
  %v9216 = vsel %vm26, %v9127, 0
  %v9219 = vsel %vm26, %v9128, 0
  %v9222 = vsel %vm26, %v9129, 0
  %v9225 = vsel %vm26, %v9130, 0
  %v9228 = vsel %vm26, %v9131, 0
  %v9231 = vsel %vm26, %v9132, 0
  %v9234 = vsel %vm26, %v9133, 0
  %v9237 = vsel %vm26, %v9134, 0
  %v9240 = vsel %vm26, %v9135, 0
  %v9243 = vsel %vm26, %v9136, 0
  %v9246 = vsel %vm26, %v9137, 0
  %v9249 = vsel %vm26, %v9138, 0
  %v9252 = vsel %vm26, %v9139, 0
  %v9255 = vsel %vm26, %v9140, 0
  %v9258 = vsel %vm26, %v9141, 0
  %v9261 = vsel %vm26, %v9142, 0
  %v9264 = vsel %vm26, %v9143, 0
  %v9267 = vsel %vm26, %v9144, 0
  %v9270 = vsel %vm26, %v9145, 0
  %v9273 = vsel %vm26, %v9146, 0
  %v9276 = vsel %vm26, %v9147, 0
  %v9279 = vsel %vm26, %v9148, 0
  %v9282 = vsel %vm26, %v9149, 0
  %v9285 = vsel %vm26, %v9150, 0
  %v9288 = vsel %vm26, %v9151, 0
  %v9291 = vsel %vm26, %v9152, 0
  %v9294 = vsel %vm26, %v9153, 0
  %v9297 = vsel %vm26, %v9154, 0
  %v9300 = vsel %vm26, %v9155, 0
  %v9303 = vsel %vm26, %v9156, 0
  %v9306 = vsel %vm26, %v9157, 0
  %v9309 = vsel %vm26, %v9158, 0
  %v9312 = vsel %vm26, %v9159, 0
  %v9315 = vsel %vm26, %v9160, 0
  %v9318 = vsel %vm26, %v9161, 0
  %v9321 = vsel %vm26, %v9162, 0
  %v9324 = vsel %vm26, %v9163, 0
  %v9327 = vsel %vm26, %v9164, 0
  %v9330 = vsel %vm26, %v9165, 0
  %v9333 = vsel %vm26, %v9166, 0
  %v9336 = vsel %vm26, %v9167, 0
  %v9339 = vsel %vm26, %v9168, 0
  %v9342 = vsel %vm26, %v9169, 0
  %v9345 = vsel %vm26, %v9170, 0
  %v9348 = vsel %vm26, %v9171, 0
  %v9351 = vsel %vm26, %v9172, 0
  %v9354 = vsel %vm26, %v9173, 0
  %v9357 = vsel %vm26, %v9174, 0
  %v9360 = vsel %vm26, %v9175, 0
  %v9363 = vsel %vm26, %v9176, 0
  %v9366 = vsel %vm26, %v9177, 0
  %v9369 = vsel %vm26, %v9178, 0
  %v9372 = vsel %vm26, %v9179, 0
  %v9375 = vsel %vm566, %v9181, 0
  %9377 = vmatprep.subr.mxu0 0.0
  %9378 = vmatpush1.msra.mxu0 %v9375
  %9379 = vmatprep.subr.mxu0 0.0
  %9380 = vmatpush1.msra.mxu0 0.0
  %9381 = vmatprep.subr.mxu0 0.0
  %9382 = vmatpush1.msra.mxu0 0.0
  %9383 = vmatprep.subr.mxu0 0.0
  %9384 = vmatpush1.msra.mxu0 0.0
  %9385 = vmatprep.subr.mxu0 0.0
  %9386 = vmatpush1.msra.mxu0 0.0
  %9387 = vmatprep.subr.mxu0 0.0
  %9388 = vmatpush1.msra.mxu0 0.0
  %9389 = vmatprep.subr.mxu0 0.0
  %9390 = vmatpush1.msra.mxu0 0.0
  %9391 = vmatprep.subr.mxu0 0.0
  %9392 = vmatpush1.msra.mxu0 0.0
  %9393 = vmatprep.subr.mxu0 0.0
  %9394 = vmatpush1.msra.mxu0 0.0
  %9395 = vmatprep.subr.mxu0 0.0
  %9396 = vmatpush1.msra.mxu0 0.0
  %9397 = vmatprep.subr.mxu0 0.0
  %9398 = vmatpush1.msra.mxu0 0.0
  %9399 = vmatprep.subr.mxu0 0.0
  %9400 = vmatpush1.msra.mxu0 0.0
  %9401 = vmatprep.subr.mxu0 0.0
  %9402 = vmatpush1.msra.mxu0 0.0
  %9403 = vmatprep.subr.mxu0 0.0
  %9404 = vmatpush1.msra.mxu0 0.0
  %9405 = vmatprep.subr.mxu0 0.0
  %9406 = vmatpush1.msra.mxu0 0.0
  %9407 = vmatprep.subr.mxu0 0.0
  %9408 = vmatpush1.msra.mxu0 0.0
  %9409 = vmatprep.subr.mxu0 0.0
  %9410 = vmatpush1.msra.mxu0 0.0
  %9411 = vmatprep.subr.mxu0 0.0
  %9412 = vmatpush1.msra.mxu0 0.0
  %9413 = vmatprep.subr.mxu0 0.0
  %9414 = vmatpush1.msra.mxu0 0.0
  %9415 = vmatprep.subr.mxu0 0.0
  %9416 = vmatpush1.msra.mxu0 0.0
  %9417 = vmatprep.subr.mxu0 0.0
  %9418 = vmatpush1.msra.mxu0 0.0
  %9419 = vmatprep.subr.mxu0 0.0
  %9420 = vmatpush1.msra.mxu0 0.0
  %9421 = vmatprep.subr.mxu0 0.0
  %9422 = vmatpush1.msra.mxu0 0.0
  %9423 = vmatprep.subr.mxu0 0.0
  %9424 = vmatpush1.msra.mxu0 0.0
  %9425 = vmatprep.subr.mxu0 0.0
  %9426 = vmatpush1.msra.mxu0 0.0
  %9427 = vmatprep.subr.mxu0 0.0
  %9428 = vmatpush1.msra.mxu0 0.0
  %9429 = vmatprep.subr.mxu0 0.0
  %9430 = vmatpush1.msra.mxu0 0.0
  %9431 = vmatprep.subr.mxu0 0.0
  %9432 = vmatpush1.msra.mxu0 0.0
  %9433 = vmatprep.subr.mxu0 0.0
  %9434 = vmatpush1.msra.mxu0 0.0
  %9435 = vmatprep.subr.mxu0 0.0
  %9436 = vmatpush1.msra.mxu0 0.0
  %9437 = vmatprep.subr.mxu0 0.0
  %9438 = vmatpush1.msra.mxu0 0.0
  %9439 = vmatprep.subr.mxu0 0.0
  %9440 = vmatpush1.msra.mxu0 0.0
  %9441 = vmatprep.mubr.f32.mxu0 0.0
  %9442 = vmatmul.mubr.f32.gmra.mrb[0].mxu0 %v9183
  %v9443 = vpop.f32.mrb[0].mxu0
  %v9444 = vadd.f32 0.0, %v9443
  %v9445 = vpop.f32.mrb[0].mxu0
  %9446 = vmatprep.mubr.f32.mxu0 0.0
  %9447 = vmatmul.mubr.f32.gmra.mrb[0].mxu0 %v9186
  %v9448 = vpop.f32.mrb[0].mxu0
  %v9449 = vadd.f32 0.0, %v9448
  %v9450 = vpop.f32.mrb[0].mxu0
  %9451 = vmatprep.mubr.f32.mxu0 0.0
  %9452 = vmatmul.mubr.f32.gmra.mrb[0].mxu0 %v9189
  %v9453 = vpop.f32.mrb[0].mxu0
  %v9454 = vadd.f32 0.0, %v9453
  %v9455 = vpop.f32.mrb[0].mxu0
  %9456 = vmatprep.mubr.f32.mxu0 0.0
  %9457 = vmatmul.mubr.f32.gmra.mrb[0].mxu0 %v9192
  %v9458 = vpop.f32.mrb[0].mxu0
  %v9459 = vadd.f32 0.0, %v9458
  %v9460 = vpop.f32.mrb[0].mxu0
  %9461 = vmatprep.mubr.f32.mxu0 0.0
  %9462 = vmatmul.mubr.f32.gmra.mrb[0].mxu0 %v9195
  %v9463 = vpop.f32.mrb[0].mxu0
  %v9464 = vadd.f32 0.0, %v9463
  %v9465 = vpop.f32.mrb[0].mxu0
  %9466 = vmatprep.mubr.f32.mxu0 0.0
  %9467 = vmatmul.mubr.f32.gmra.mrb[0].mxu0 %v9198
  %v9468 = vpop.f32.mrb[0].mxu0
  %v9469 = vadd.f32 0.0, %v9468
  %v9470 = vpop.f32.mrb[0].mxu0
  %9471 = vmatprep.mubr.f32.mxu0 0.0
  %9472 = vmatmul.mubr.f32.gmra.mrb[0].mxu0 %v9201
  %v9473 = vpop.f32.mrb[0].mxu0
  %v9474 = vadd.f32 0.0, %v9473
  %v9475 = vpop.f32.mrb[0].mxu0
  %9476 = vmatprep.mubr.f32.mxu0 0.0
  %9477 = vmatmul.mubr.f32.gmra.mrb[0].mxu0 %v9204
  %v9478 = vpop.f32.mrb[0].mxu0
  %v9479 = vadd.f32 0.0, %v9478
  %v9480 = vpop.f32.mrb[0].mxu0
  %9481 = vmatprep.mubr.f32.mxu0 0.0
  %9482 = vmatmul.mubr.f32.gmra.mrb[0].mxu0 %v9207
  %v9483 = vpop.f32.mrb[0].mxu0
  %v9484 = vadd.f32 0.0, %v9483
  %v9485 = vpop.f32.mrb[0].mxu0
  %9486 = vmatprep.mubr.f32.mxu0 0.0
  %9487 = vmatmul.mubr.f32.gmra.mrb[0].mxu0 %v9210
  %v9488 = vpop.f32.mrb[0].mxu0
  %v9489 = vadd.f32 0.0, %v9488
  %v9490 = vpop.f32.mrb[0].mxu0
  %9491 = vmatprep.mubr.f32.mxu0 0.0
  %9492 = vmatmul.mubr.f32.gmra.mrb[0].mxu0 %v9213
  %v9493 = vpop.f32.mrb[0].mxu0
  %v9494 = vadd.f32 0.0, %v9493
  %v9495 = vpop.f32.mrb[0].mxu0
  %9496 = vmatprep.mubr.f32.mxu0 0.0
  %9497 = vmatmul.mubr.f32.gmra.mrb[0].mxu0 %v9216
  %v9498 = vpop.f32.mrb[0].mxu0
  %v9499 = vadd.f32 0.0, %v9498
  %v9500 = vpop.f32.mrb[0].mxu0
  %9501 = vmatprep.mubr.f32.mxu0 0.0
  %9502 = vmatmul.mubr.f32.gmra.mrb[0].mxu0 %v9219
  %v9503 = vpop.f32.mrb[0].mxu0
  %v9504 = vadd.f32 0.0, %v9503
  %v9505 = vpop.f32.mrb[0].mxu0
  %9506 = vmatprep.mubr.f32.mxu0 0.0
  %9507 = vmatmul.mubr.f32.gmra.mrb[0].mxu0 %v9222
  %v9508 = vpop.f32.mrb[0].mxu0
  %v9509 = vadd.f32 0.0, %v9508
  %v9510 = vpop.f32.mrb[0].mxu0
  %9511 = vmatprep.mubr.f32.mxu0 0.0
  %9512 = vmatmul.mubr.f32.gmra.mrb[0].mxu0 %v9225
  %v9513 = vpop.f32.mrb[0].mxu0
  %v9514 = vadd.f32 0.0, %v9513
  %v9515 = vpop.f32.mrb[0].mxu0
  %9516 = vmatprep.mubr.f32.mxu0 0.0
  %9517 = vmatmul.mubr.f32.gmra.mrb[0].mxu0 %v9228
  %v9518 = vpop.f32.mrb[0].mxu0
  %v9519 = vadd.f32 0.0, %v9518
  %v9520 = vpop.f32.mrb[0].mxu0
  %9521 = vmatprep.mubr.f32.mxu0 0.0
  %9522 = vmatmul.mubr.f32.gmra.mrb[0].mxu0 %v9231
  %v9523 = vpop.f32.mrb[0].mxu0
  %v9524 = vadd.f32 0.0, %v9523
  %v9525 = vpop.f32.mrb[0].mxu0
  %9526 = vmatprep.mubr.f32.mxu0 0.0
  %9527 = vmatmul.mubr.f32.gmra.mrb[0].mxu0 %v9234
  %v9528 = vpop.f32.mrb[0].mxu0
  %v9529 = vadd.f32 0.0, %v9528
  %v9530 = vpop.f32.mrb[0].mxu0
  %9531 = vmatprep.mubr.f32.mxu0 0.0
  %9532 = vmatmul.mubr.f32.gmra.mrb[0].mxu0 %v9237
  %v9533 = vpop.f32.mrb[0].mxu0
  %v9534 = vadd.f32 0.0, %v9533
  %v9535 = vpop.f32.mrb[0].mxu0
  %9536 = vmatprep.mubr.f32.mxu0 0.0
  %9537 = vmatmul.mubr.f32.gmra.mrb[0].mxu0 %v9240
  %v9538 = vpop.f32.mrb[0].mxu0
  %v9539 = vadd.f32 0.0, %v9538
  %v9540 = vpop.f32.mrb[0].mxu0
  %9541 = vmatprep.mubr.f32.mxu0 0.0
  %9542 = vmatmul.mubr.f32.gmra.mrb[0].mxu0 %v9243
  %v9543 = vpop.f32.mrb[0].mxu0
  %v9544 = vadd.f32 0.0, %v9543
  %v9545 = vpop.f32.mrb[0].mxu0
  %9546 = vmatprep.mubr.f32.mxu0 0.0
  %9547 = vmatmul.mubr.f32.gmra.mrb[0].mxu0 %v9246
  %v9548 = vpop.f32.mrb[0].mxu0
  %v9549 = vadd.f32 0.0, %v9548
  %v9550 = vpop.f32.mrb[0].mxu0
  %9551 = vmatprep.mubr.f32.mxu0 0.0
  %9552 = vmatmul.mubr.f32.gmra.mrb[0].mxu0 %v9249
  %v9553 = vpop.f32.mrb[0].mxu0
  %v9554 = vadd.f32 0.0, %v9553
  %v9555 = vpop.f32.mrb[0].mxu0
  %9556 = vmatprep.mubr.f32.mxu0 0.0
  %9557 = vmatmul.mubr.f32.gmra.mrb[0].mxu0 %v9252
  %v9558 = vpop.f32.mrb[0].mxu0
  %v9559 = vadd.f32 0.0, %v9558
  %v9560 = vpop.f32.mrb[0].mxu0
  %9561 = vmatprep.mubr.f32.mxu0 0.0
  %9562 = vmatmul.mubr.f32.gmra.mrb[0].mxu0 %v9255
  %v9563 = vpop.f32.mrb[0].mxu0
  %v9564 = vadd.f32 0.0, %v9563
  %v9565 = vpop.f32.mrb[0].mxu0
  %9566 = vmatprep.mubr.f32.mxu0 0.0
  %9567 = vmatmul.mubr.f32.gmra.mrb[0].mxu0 %v9258
  %v9568 = vpop.f32.mrb[0].mxu0
  %v9569 = vadd.f32 0.0, %v9568
  %v9570 = vpop.f32.mrb[0].mxu0
  %9571 = vmatprep.mubr.f32.mxu0 0.0
  %9572 = vmatmul.mubr.f32.gmra.mrb[0].mxu0 %v9261
  %v9573 = vpop.f32.mrb[0].mxu0
  %v9574 = vadd.f32 0.0, %v9573
  %v9575 = vpop.f32.mrb[0].mxu0
  %9576 = vmatprep.mubr.f32.mxu0 0.0
  %9577 = vmatmul.mubr.f32.gmra.mrb[0].mxu0 %v9264
  %v9578 = vpop.f32.mrb[0].mxu0
  %v9579 = vadd.f32 0.0, %v9578
  %v9580 = vpop.f32.mrb[0].mxu0
  %9581 = vmatprep.mubr.f32.mxu0 0.0
  %9582 = vmatmul.mubr.f32.gmra.mrb[0].mxu0 %v9267
  %v9583 = vpop.f32.mrb[0].mxu0
  %v9584 = vadd.f32 0.0, %v9583
  %v9585 = vpop.f32.mrb[0].mxu0
  %9586 = vmatprep.mubr.f32.mxu0 0.0
  %9587 = vmatmul.mubr.f32.gmra.mrb[0].mxu0 %v9270
  %v9588 = vpop.f32.mrb[0].mxu0
  %v9589 = vadd.f32 0.0, %v9588
  %v9590 = vpop.f32.mrb[0].mxu0
  %9591 = vmatprep.mubr.f32.mxu0 0.0
  %9592 = vmatmul.mubr.f32.gmra.mrb[0].mxu0 %v9273
  %v9593 = vpop.f32.mrb[0].mxu0
  %v9594 = vadd.f32 0.0, %v9593
  %v9595 = vpop.f32.mrb[0].mxu0
  %9596 = vmatprep.mubr.f32.mxu0 0.0
  %9597 = vmatmul.mubr.f32.gmra.mrb[0].mxu0 %v9276
  %v9598 = vpop.f32.mrb[0].mxu0
  %v9599 = vadd.f32 0.0, %v9598
  %v9600 = vpop.f32.mrb[0].mxu0
  %9601 = vmatprep.mubr.f32.mxu0 0.0
  %9602 = vmatmul.mubr.f32.gmra.mrb[0].mxu0 %v9279
  %v9603 = vpop.f32.mrb[0].mxu0
  %v9604 = vadd.f32 0.0, %v9603
  %v9605 = vpop.f32.mrb[0].mxu0
  %9606 = vmatprep.mubr.f32.mxu0 0.0
  %9607 = vmatmul.mubr.f32.gmra.mrb[0].mxu0 %v9282
  %v9608 = vpop.f32.mrb[0].mxu0
  %v9609 = vadd.f32 0.0, %v9608
  %v9610 = vpop.f32.mrb[0].mxu0
  %9611 = vmatprep.mubr.f32.mxu0 0.0
  %9612 = vmatmul.mubr.f32.gmra.mrb[0].mxu0 %v9285
  %v9613 = vpop.f32.mrb[0].mxu0
  %v9614 = vadd.f32 0.0, %v9613
  %v9615 = vpop.f32.mrb[0].mxu0
  %9616 = vmatprep.mubr.f32.mxu0 0.0
  %9617 = vmatmul.mubr.f32.gmra.mrb[0].mxu0 %v9288
  %v9618 = vpop.f32.mrb[0].mxu0
  %v9619 = vadd.f32 0.0, %v9618
  %v9620 = vpop.f32.mrb[0].mxu0
  %9621 = vmatprep.mubr.f32.mxu0 0.0
  %9622 = vmatmul.mubr.f32.gmra.mrb[0].mxu0 %v9291
  %v9623 = vpop.f32.mrb[0].mxu0
  %v9624 = vadd.f32 0.0, %v9623
  %v9625 = vpop.f32.mrb[0].mxu0
  %9626 = vmatprep.mubr.f32.mxu0 0.0
  %9627 = vmatmul.mubr.f32.gmra.mrb[0].mxu0 %v9294
  %v9628 = vpop.f32.mrb[0].mxu0
  %v9629 = vadd.f32 0.0, %v9628
  %v9630 = vpop.f32.mrb[0].mxu0
  %9631 = vmatprep.mubr.f32.mxu0 0.0
  %9632 = vmatmul.mubr.f32.gmra.mrb[0].mxu0 %v9297
  %v9633 = vpop.f32.mrb[0].mxu0
  %v9634 = vadd.f32 0.0, %v9633
  %v9635 = vpop.f32.mrb[0].mxu0
  %9636 = vmatprep.mubr.f32.mxu0 0.0
  %9637 = vmatmul.mubr.f32.gmra.mrb[0].mxu0 %v9300
  %v9638 = vpop.f32.mrb[0].mxu0
  %v9639 = vadd.f32 0.0, %v9638
  %v9640 = vpop.f32.mrb[0].mxu0
  %9641 = vmatprep.mubr.f32.mxu0 0.0
  %9642 = vmatmul.mubr.f32.gmra.mrb[0].mxu0 %v9303
  %v9643 = vpop.f32.mrb[0].mxu0
  %v9644 = vadd.f32 0.0, %v9643
  %v9645 = vpop.f32.mrb[0].mxu0
  %9646 = vmatprep.mubr.f32.mxu0 0.0
  %9647 = vmatmul.mubr.f32.gmra.mrb[0].mxu0 %v9306
  %v9648 = vpop.f32.mrb[0].mxu0
  %v9649 = vadd.f32 0.0, %v9648
  %v9650 = vpop.f32.mrb[0].mxu0
  %9651 = vmatprep.mubr.f32.mxu0 0.0
  %9652 = vmatmul.mubr.f32.gmra.mrb[0].mxu0 %v9309
  %v9653 = vpop.f32.mrb[0].mxu0
  %v9654 = vadd.f32 0.0, %v9653
  %v9655 = vpop.f32.mrb[0].mxu0
  %9656 = vmatprep.mubr.f32.mxu0 0.0
  %9657 = vmatmul.mubr.f32.gmra.mrb[0].mxu0 %v9312
  %v9658 = vpop.f32.mrb[0].mxu0
  %v9659 = vadd.f32 0.0, %v9658
  %v9660 = vpop.f32.mrb[0].mxu0
  %9661 = vmatprep.mubr.f32.mxu0 0.0
  %9662 = vmatmul.mubr.f32.gmra.mrb[0].mxu0 %v9315
  %v9663 = vpop.f32.mrb[0].mxu0
  %v9664 = vadd.f32 0.0, %v9663
  %v9665 = vpop.f32.mrb[0].mxu0
  %9666 = vmatprep.mubr.f32.mxu0 0.0
  %9667 = vmatmul.mubr.f32.gmra.mrb[0].mxu0 %v9318
  %v9668 = vpop.f32.mrb[0].mxu0
  %v9669 = vadd.f32 0.0, %v9668
  %v9670 = vpop.f32.mrb[0].mxu0
  %9671 = vmatprep.mubr.f32.mxu0 0.0
  %9672 = vmatmul.mubr.f32.gmra.mrb[0].mxu0 %v9321
  %v9673 = vpop.f32.mrb[0].mxu0
  %v9674 = vadd.f32 0.0, %v9673
  %v9675 = vpop.f32.mrb[0].mxu0
  %9676 = vmatprep.mubr.f32.mxu0 0.0
  %9677 = vmatmul.mubr.f32.gmra.mrb[0].mxu0 %v9324
  %v9678 = vpop.f32.mrb[0].mxu0
  %v9679 = vadd.f32 0.0, %v9678
  %v9680 = vpop.f32.mrb[0].mxu0
  %9681 = vmatprep.mubr.f32.mxu0 0.0
  %9682 = vmatmul.mubr.f32.gmra.mrb[0].mxu0 %v9327
  %v9683 = vpop.f32.mrb[0].mxu0
  %v9684 = vadd.f32 0.0, %v9683
  %v9685 = vpop.f32.mrb[0].mxu0
  %9686 = vmatprep.mubr.f32.mxu0 0.0
  %9687 = vmatmul.mubr.f32.gmra.mrb[0].mxu0 %v9330
  %v9688 = vpop.f32.mrb[0].mxu0
  %v9689 = vadd.f32 0.0, %v9688
  %v9690 = vpop.f32.mrb[0].mxu0
  %9691 = vmatprep.mubr.f32.mxu0 0.0
  %9692 = vmatmul.mubr.f32.gmra.mrb[0].mxu0 %v9333
  %v9693 = vpop.f32.mrb[0].mxu0
  %v9694 = vadd.f32 0.0, %v9693
  %v9695 = vpop.f32.mrb[0].mxu0
  %9696 = vmatprep.mubr.f32.mxu0 0.0
  %9697 = vmatmul.mubr.f32.gmra.mrb[0].mxu0 %v9336
  %v9698 = vpop.f32.mrb[0].mxu0
  %v9699 = vadd.f32 0.0, %v9698
  %v9700 = vpop.f32.mrb[0].mxu0
  %9701 = vmatprep.mubr.f32.mxu0 0.0
  %9702 = vmatmul.mubr.f32.gmra.mrb[0].mxu0 %v9339
  %v9703 = vpop.f32.mrb[0].mxu0
  %v9704 = vadd.f32 0.0, %v9703
  %v9705 = vpop.f32.mrb[0].mxu0
  %9706 = vmatprep.mubr.f32.mxu0 0.0
  %9707 = vmatmul.mubr.f32.gmra.mrb[0].mxu0 %v9342
  %v9708 = vpop.f32.mrb[0].mxu0
  %v9709 = vadd.f32 0.0, %v9708
  %v9710 = vpop.f32.mrb[0].mxu0
  %9711 = vmatprep.mubr.f32.mxu0 0.0
  %9712 = vmatmul.mubr.f32.gmra.mrb[0].mxu0 %v9345
  %v9713 = vpop.f32.mrb[0].mxu0
  %v9714 = vadd.f32 0.0, %v9713
  %v9715 = vpop.f32.mrb[0].mxu0
  %9716 = vmatprep.mubr.f32.mxu0 0.0
  %9717 = vmatmul.mubr.f32.gmra.mrb[0].mxu0 %v9348
  %v9718 = vpop.f32.mrb[0].mxu0
  %v9719 = vadd.f32 0.0, %v9718
  %v9720 = vpop.f32.mrb[0].mxu0
  %9721 = vmatprep.mubr.f32.mxu0 0.0
  %9722 = vmatmul.mubr.f32.gmra.mrb[0].mxu0 %v9351
  %v9723 = vpop.f32.mrb[0].mxu0
  %v9724 = vadd.f32 0.0, %v9723
  %v9725 = vpop.f32.mrb[0].mxu0
  %9726 = vmatprep.mubr.f32.mxu0 0.0
  %9727 = vmatmul.mubr.f32.gmra.mrb[0].mxu0 %v9354
  %v9728 = vpop.f32.mrb[0].mxu0
  %v9729 = vadd.f32 0.0, %v9728
  %v9730 = vpop.f32.mrb[0].mxu0
  %9731 = vmatprep.mubr.f32.mxu0 0.0
  %9732 = vmatmul.mubr.f32.gmra.mrb[0].mxu0 %v9357
  %v9733 = vpop.f32.mrb[0].mxu0
  %v9734 = vadd.f32 0.0, %v9733
  %v9735 = vpop.f32.mrb[0].mxu0
  %9736 = vmatprep.mubr.f32.mxu0 0.0
  %9737 = vmatmul.mubr.f32.gmra.mrb[0].mxu0 %v9360
  %v9738 = vpop.f32.mrb[0].mxu0
  %v9739 = vadd.f32 0.0, %v9738
  %v9740 = vpop.f32.mrb[0].mxu0
  %9741 = vmatprep.mubr.f32.mxu0 0.0
  %9742 = vmatmul.mubr.f32.gmra.mrb[0].mxu0 %v9363
  %v9743 = vpop.f32.mrb[0].mxu0
  %v9744 = vadd.f32 0.0, %v9743
  %v9745 = vpop.f32.mrb[0].mxu0
  %9746 = vmatprep.mubr.f32.mxu0 0.0
  %9747 = vmatmul.mubr.f32.gmra.mrb[0].mxu0 %v9366
  %v9748 = vpop.f32.mrb[0].mxu0
  %v9749 = vadd.f32 0.0, %v9748
  %v9750 = vpop.f32.mrb[0].mxu0
  %9751 = vmatprep.mubr.f32.mxu0 0.0
  %9752 = vmatmul.mubr.f32.gmra.mrb[0].mxu0 %v9369
  %v9753 = vpop.f32.mrb[0].mxu0
  %v9754 = vadd.f32 0.0, %v9753
  %v9755 = vpop.f32.mrb[0].mxu0
  %9756 = vmatprep.mubr.f32.mxu0 0.0
  %9757 = vmatmul.mubr.f32.gmra.mrb[0].mxu0 %v9372
  %v9758 = vpop.f32.mrb[0].mxu0
  %v9759 = vadd.f32 0.0, %v9758
  %v9760 = vpop.f32.mrb[0].mxu0
  %9761 = vdwg.mxu0
  %v9762 = vadd.f32 %v9052, %v9444
  %v9763 = vadd.f32 %v9053, %v9449
  %v9764 = vadd.f32 %v9054, %v9454
  %v9765 = vadd.f32 %v9055, %v9459
  %v9766 = vadd.f32 %v9056, %v9464
  %v9767 = vadd.f32 %v9057, %v9469
  %v9768 = vadd.f32 %v9058, %v9474
  %v9769 = vadd.f32 %v9059, %v9479
  %v9770 = vadd.f32 %v9060, %v9484
  %v9771 = vadd.f32 %v9061, %v9489
  %v9772 = vadd.f32 %v9062, %v9494
  %v9773 = vadd.f32 %v9063, %v9499
  %v9774 = vadd.f32 %v9064, %v9504
  %v9775 = vadd.f32 %v9065, %v9509
  %v9776 = vadd.f32 %v9066, %v9514
  %v9777 = vadd.f32 %v9067, %v9519
  %v9778 = vadd.f32 %v9068, %v9524
  %v9779 = vadd.f32 %v9069, %v9529
  %v9780 = vadd.f32 %v9070, %v9534
  %v9781 = vadd.f32 %v9071, %v9539
  %v9782 = vadd.f32 %v9072, %v9544
  %v9783 = vadd.f32 %v9073, %v9549
  %v9784 = vadd.f32 %v9074, %v9554
  %v9785 = vadd.f32 %v9075, %v9559
  %v9786 = vadd.f32 %v9076, %v9564
  %v9787 = vadd.f32 %v9077, %v9569
  %v9788 = vadd.f32 %v9078, %v9574
  %v9789 = vadd.f32 %v9079, %v9579
  %v9790 = vadd.f32 %v9080, %v9584
  %v9791 = vadd.f32 %v9081, %v9589
  %v9792 = vadd.f32 %v9082, %v9594
  %v9793 = vadd.f32 %v9083, %v9599
  %v9794 = vadd.f32 %v9084, %v9604
  %v9795 = vadd.f32 %v9085, %v9609
  %v9796 = vadd.f32 %v9086, %v9614
  %v9797 = vadd.f32 %v9087, %v9619
  %v9798 = vadd.f32 %v9088, %v9624
  %v9799 = vadd.f32 %v9089, %v9629
  %v9800 = vadd.f32 %v9090, %v9634
  %v9801 = vadd.f32 %v9091, %v9639
  %v9802 = vadd.f32 %v9092, %v9644
  %v9803 = vadd.f32 %v9093, %v9649
  %v9804 = vadd.f32 %v9094, %v9654
  %v9805 = vadd.f32 %v9095, %v9659
  %v9806 = vadd.f32 %v9096, %v9664
  %v9807 = vadd.f32 %v9097, %v9669
  %v9808 = vadd.f32 %v9098, %v9674
  %v9809 = vadd.f32 %v9099, %v9679
  %v9810 = vadd.f32 %v9100, %v9684
  %v9811 = vadd.f32 %v9101, %v9689
  %v9812 = vadd.f32 %v9102, %v9694
  %v9813 = vadd.f32 %v9103, %v9699
  %v9814 = vadd.f32 %v9104, %v9704
  %v9815 = vadd.f32 %v9105, %v9709
  %v9816 = vadd.f32 %v9106, %v9714
  %v9817 = vadd.f32 %v9107, %v9719
  %v9818 = vadd.f32 %v9108, %v9724
  %v9819 = vadd.f32 %v9109, %v9729
  %v9820 = vadd.f32 %v9110, %v9734
  %v9821 = vadd.f32 %v9111, %v9739
  %v9822 = vadd.f32 %v9112, %v9744
  %v9823 = vadd.f32 %v9113, %v9749
  %v9824 = vadd.f32 %v9114, %v9754
  %v9825 = vadd.f32 %v9115, %v9759
  %v9826 = vld [vmem:[%s178 + $0x1] sm:$0xff]
  %v9827 = vld [vmem:[%s178 + $0x9] sm:$0xff]
  %v9828 = vld [vmem:[%s178 + $0x19] sm:$0xff]
  %v9829 = vld [vmem:[%s178 + $0x21] sm:$0xff]
  %v9830 = vld [vmem:[%s178 + $0x31] sm:$0xff]
  %v9831 = vld [vmem:[%s178 + $0x39] sm:$0xff]
  %v9832 = vld [vmem:[%s178 + $0x49] sm:$0xff]
  %v9833 = vld [vmem:[%s178 + $0x51] sm:$0xff]
  %v9834 = vld [vmem:[%s178 + $0x61] sm:$0xff]
  %v9835 = vld [vmem:[%s178 + $0x69] sm:$0xff]
  %v9836 = vld [vmem:[%s178 + $0x79] sm:$0xff]
  %v9837 = vld [vmem:[%s178 + $0x81] sm:$0xff]
  %v9838 = vld [vmem:[%s178 + $0x91] sm:$0xff]
  %v9839 = vld [vmem:[%s178 + $0x99] sm:$0xff]
  %v9840 = vld [vmem:[%s178 + $0xa9] sm:$0xff]
  %v9841 = vld [vmem:[%s178 + $0xb1] sm:$0xff]
  %v9842 = vld [vmem:[%s178 + $0xc1] sm:$0xff]
  %v9843 = vld [vmem:[%s178 + $0xc9] sm:$0xff]
  %v9844 = vld [vmem:[%s178 + $0xd9] sm:$0xff]
  %v9845 = vld [vmem:[%s178 + $0xe1] sm:$0xff]
  %v9846 = vld [vmem:[%s178 + $0xf1] sm:$0xff]
  %v9847 = vld [vmem:[%s178 + $0xf9] sm:$0xff]
  %v9848 = vld [vmem:[%s178 + $0x109] sm:$0xff]
  %v9849 = vld [vmem:[%s178 + $0x111] sm:$0xff]
  %v9850 = vld [vmem:[%s178 + $0x121] sm:$0xff]
  %v9851 = vld [vmem:[%s178 + $0x129] sm:$0xff]
  %v9852 = vld [vmem:[%s178 + $0x139] sm:$0xff]
  %v9853 = vld [vmem:[%s178 + $0x141] sm:$0xff]
  %v9854 = vld [vmem:[%s178 + $0x151] sm:$0xff]
  %v9855 = vld [vmem:[%s178 + $0x159] sm:$0xff]
  %v9856 = vld [vmem:[%s178 + $0x169] sm:$0xff]
  %v9857 = vld [vmem:[%s178 + $0x171] sm:$0xff]
  %v9858 = vld [vmem:[%s178 + $0x1b1] sm:$0xff]
  %v9859 = vld [vmem:[%s178 + $0x1b9] sm:$0xff]
  %v9860 = vld [vmem:[%s178 + $0x1c9] sm:$0xff]
  %v9861 = vld [vmem:[%s178 + $0x1d1] sm:$0xff]
  %v9862 = vld [vmem:[%s178 + $0x1e1] sm:$0xff]
  %v9863 = vld [vmem:[%s178 + $0x1e9] sm:$0xff]
  %v9864 = vld [vmem:[%s178 + $0x1f9] sm:$0xff]
  %v9865 = vld [vmem:[%s178 + $0x201] sm:$0xff]
  %v9866 = vld [vmem:[%s178 + $0x211] sm:$0xff]
  %v9867 = vld [vmem:[%s178 + $0x219] sm:$0xff]
  %v9868 = vld [vmem:[%s178 + $0x229] sm:$0xff]
  %v9869 = vld [vmem:[%s178 + $0x231] sm:$0xff]
  %v9870 = vld [vmem:[%s178 + $0x241] sm:$0xff]
  %v9871 = vld [vmem:[%s178 + $0x249] sm:$0xff]
  %v9872 = vld [vmem:[%s178 + $0x259] sm:$0xff]
  %v9873 = vld [vmem:[%s178 + $0x261] sm:$0xff]
  %v9874 = vld [vmem:[%s178 + $0x271] sm:$0xff]
  %v9875 = vld [vmem:[%s178 + $0x279] sm:$0xff]
  %v9876 = vld [vmem:[%s178 + $0x289] sm:$0xff]
  %v9877 = vld [vmem:[%s178 + $0x291] sm:$0xff]
  %v9878 = vld [vmem:[%s178 + $0x2a1] sm:$0xff]
  %v9879 = vld [vmem:[%s178 + $0x2a9] sm:$0xff]
  %v9880 = vld [vmem:[%s178 + $0x2b9] sm:$0xff]
  %v9881 = vld [vmem:[%s178 + $0x2c1] sm:$0xff]
  %v9882 = vld [vmem:[%s178 + $0x2d1] sm:$0xff]
  %v9883 = vld [vmem:[%s178 + $0x2d9] sm:$0xff]
  %v9884 = vld [vmem:[%s178 + $0x2e9] sm:$0xff]
  %v9885 = vld [vmem:[%s178 + $0x2f1] sm:$0xff]
  %v9886 = vld [vmem:[%s178 + $0x301] sm:$0xff]
  %v9887 = vld [vmem:[%s178 + $0x309] sm:$0xff]
  %v9888 = vld [vmem:[%s178 + $0x319] sm:$0xff]
  %v9889 = vld [vmem:[%s178 + $0x321] sm:$0xff]
  %s9890 = scalar_lea.vmem %s4, 16
  %v9891 = vld [vmem:[%s9890] sm:$0xf]
  %v9893 = vsel %vm26, %v9826, 0
  %v9896 = vsel %vm26, %v9827, 0
  %v9899 = vsel %vm26, %v9828, 0
  %v9902 = vsel %vm26, %v9829, 0
  %v9905 = vsel %vm26, %v9830, 0
  %v9908 = vsel %vm26, %v9831, 0
  %v9911 = vsel %vm26, %v9832, 0
  %v9914 = vsel %vm26, %v9833, 0
  %v9917 = vsel %vm26, %v9834, 0
  %v9920 = vsel %vm26, %v9835, 0
  %v9923 = vsel %vm26, %v9836, 0
  %v9926 = vsel %vm26, %v9837, 0
  %v9929 = vsel %vm26, %v9838, 0
  %v9932 = vsel %vm26, %v9839, 0
  %v9935 = vsel %vm26, %v9840, 0
  %v9938 = vsel %vm26, %v9841, 0
  %v9941 = vsel %vm26, %v9842, 0
  %v9944 = vsel %vm26, %v9843, 0
  %v9947 = vsel %vm26, %v9844, 0
  %v9950 = vsel %vm26, %v9845, 0
  %v9953 = vsel %vm26, %v9846, 0
  %v9956 = vsel %vm26, %v9847, 0
  %v9959 = vsel %vm26, %v9848, 0
  %v9962 = vsel %vm26, %v9849, 0
  %v9965 = vsel %vm26, %v9850, 0
  %v9968 = vsel %vm26, %v9851, 0
  %v9971 = vsel %vm26, %v9852, 0
  %v9974 = vsel %vm26, %v9853, 0
  %v9977 = vsel %vm26, %v9854, 0
  %v9980 = vsel %vm26, %v9855, 0
  %v9983 = vsel %vm26, %v9856, 0
  %v9986 = vsel %vm26, %v9857, 0
  %v9989 = vsel %vm26, %v9858, 0
  %v9992 = vsel %vm26, %v9859, 0
  %v9995 = vsel %vm26, %v9860, 0
  %v9998 = vsel %vm26, %v9861, 0
  %v10001 = vsel %vm26, %v9862, 0
  %v10004 = vsel %vm26, %v9863, 0
  %v10007 = vsel %vm26, %v9864, 0
  %v10010 = vsel %vm26, %v9865, 0
  %v10013 = vsel %vm26, %v9866, 0
  %v10016 = vsel %vm26, %v9867, 0
  %v10019 = vsel %vm26, %v9868, 0
  %v10022 = vsel %vm26, %v9869, 0
  %v10025 = vsel %vm26, %v9870, 0
  %v10028 = vsel %vm26, %v9871, 0
  %v10031 = vsel %vm26, %v9872, 0
  %v10034 = vsel %vm26, %v9873, 0
  %v10037 = vsel %vm26, %v9874, 0
  %v10040 = vsel %vm26, %v9875, 0
  %v10043 = vsel %vm26, %v9876, 0
  %v10046 = vsel %vm26, %v9877, 0
  %v10049 = vsel %vm26, %v9878, 0
  %v10052 = vsel %vm26, %v9879, 0
  %v10055 = vsel %vm26, %v9880, 0
  %v10058 = vsel %vm26, %v9881, 0
  %v10061 = vsel %vm26, %v9882, 0
  %v10064 = vsel %vm26, %v9883, 0
  %v10067 = vsel %vm26, %v9884, 0
  %v10070 = vsel %vm26, %v9885, 0
  %v10073 = vsel %vm26, %v9886, 0
  %v10076 = vsel %vm26, %v9887, 0
  %v10079 = vsel %vm26, %v9888, 0
  %v10082 = vsel %vm26, %v9889, 0
  %v10085 = vsel %vm566, %v9891, 0
  %10087 = vmatprep.subr.mxu0 0.0
  %10088 = vmatpush1.msra.mxu0 %v10085
  %10089 = vmatprep.subr.mxu0 0.0
  %10090 = vmatpush1.msra.mxu0 0.0
  %10091 = vmatprep.subr.mxu0 0.0
  %10092 = vmatpush1.msra.mxu0 0.0
  %10093 = vmatprep.subr.mxu0 0.0
  %10094 = vmatpush1.msra.mxu0 0.0
  %10095 = vmatprep.subr.mxu0 0.0
  %10096 = vmatpush1.msra.mxu0 0.0
  %10097 = vmatprep.subr.mxu0 0.0
  %10098 = vmatpush1.msra.mxu0 0.0
  %10099 = vmatprep.subr.mxu0 0.0
  %10100 = vmatpush1.msra.mxu0 0.0
  %10101 = vmatprep.subr.mxu0 0.0
  %10102 = vmatpush1.msra.mxu0 0.0
  %10103 = vmatprep.subr.mxu0 0.0
  %10104 = vmatpush1.msra.mxu0 0.0
  %10105 = vmatprep.subr.mxu0 0.0
  %10106 = vmatpush1.msra.mxu0 0.0
  %10107 = vmatprep.subr.mxu0 0.0
  %10108 = vmatpush1.msra.mxu0 0.0
  %10109 = vmatprep.subr.mxu0 0.0
  %10110 = vmatpush1.msra.mxu0 0.0
  %10111 = vmatprep.subr.mxu0 0.0
  %10112 = vmatpush1.msra.mxu0 0.0
  %10113 = vmatprep.subr.mxu0 0.0
  %10114 = vmatpush1.msra.mxu0 0.0
  %10115 = vmatprep.subr.mxu0 0.0
  %10116 = vmatpush1.msra.mxu0 0.0
  %10117 = vmatprep.subr.mxu0 0.0
  %10118 = vmatpush1.msra.mxu0 0.0
  %10119 = vmatprep.subr.mxu0 0.0
  %10120 = vmatpush1.msra.mxu0 0.0
  %10121 = vmatprep.subr.mxu0 0.0
  %10122 = vmatpush1.msra.mxu0 0.0
  %10123 = vmatprep.subr.mxu0 0.0
  %10124 = vmatpush1.msra.mxu0 0.0
  %10125 = vmatprep.subr.mxu0 0.0
  %10126 = vmatpush1.msra.mxu0 0.0
  %10127 = vmatprep.subr.mxu0 0.0
  %10128 = vmatpush1.msra.mxu0 0.0
  %10129 = vmatprep.subr.mxu0 0.0
  %10130 = vmatpush1.msra.mxu0 0.0
  %10131 = vmatprep.subr.mxu0 0.0
  %10132 = vmatpush1.msra.mxu0 0.0
  %10133 = vmatprep.subr.mxu0 0.0
  %10134 = vmatpush1.msra.mxu0 0.0
  %10135 = vmatprep.subr.mxu0 0.0
  %10136 = vmatpush1.msra.mxu0 0.0
  %10137 = vmatprep.subr.mxu0 0.0
  %10138 = vmatpush1.msra.mxu0 0.0
  %10139 = vmatprep.subr.mxu0 0.0
  %10140 = vmatpush1.msra.mxu0 0.0
  %10141 = vmatprep.subr.mxu0 0.0
  %10142 = vmatpush1.msra.mxu0 0.0
  %10143 = vmatprep.subr.mxu0 0.0
  %10144 = vmatpush1.msra.mxu0 0.0
  %10145 = vmatprep.subr.mxu0 0.0
  %10146 = vmatpush1.msra.mxu0 0.0
  %10147 = vmatprep.subr.mxu0 0.0
  %10148 = vmatpush1.msra.mxu0 0.0
  %10149 = vmatprep.subr.mxu0 0.0
  %10150 = vmatpush1.msra.mxu0 0.0
  %10151 = vmatprep.mubr.f32.mxu0 0.0
  %10152 = vmatmul.mubr.f32.gmra.mrb[0].mxu0 %v9893
  %v10153 = vpop.f32.mrb[0].mxu0
  %v10154 = vadd.f32 0.0, %v10153
  %v10155 = vpop.f32.mrb[0].mxu0
  %10156 = vmatprep.mubr.f32.mxu0 0.0
  %10157 = vmatmul.mubr.f32.gmra.mrb[0].mxu0 %v9896
  %v10158 = vpop.f32.mrb[0].mxu0
  %v10159 = vadd.f32 0.0, %v10158
  %v10160 = vpop.f32.mrb[0].mxu0
  %10161 = vmatprep.mubr.f32.mxu0 0.0
  %10162 = vmatmul.mubr.f32.gmra.mrb[0].mxu0 %v9899
  %v10163 = vpop.f32.mrb[0].mxu0
  %v10164 = vadd.f32 0.0, %v10163
  %v10165 = vpop.f32.mrb[0].mxu0
  %10166 = vmatprep.mubr.f32.mxu0 0.0
  %10167 = vmatmul.mubr.f32.gmra.mrb[0].mxu0 %v9902
  %v10168 = vpop.f32.mrb[0].mxu0
  %v10169 = vadd.f32 0.0, %v10168
  %v10170 = vpop.f32.mrb[0].mxu0
  %10171 = vmatprep.mubr.f32.mxu0 0.0
  %10172 = vmatmul.mubr.f32.gmra.mrb[0].mxu0 %v9905
  %v10173 = vpop.f32.mrb[0].mxu0
  %v10174 = vadd.f32 0.0, %v10173
  %v10175 = vpop.f32.mrb[0].mxu0
  %10176 = vmatprep.mubr.f32.mxu0 0.0
  %10177 = vmatmul.mubr.f32.gmra.mrb[0].mxu0 %v9908
  %v10178 = vpop.f32.mrb[0].mxu0
  %v10179 = vadd.f32 0.0, %v10178
  %v10180 = vpop.f32.mrb[0].mxu0
  %10181 = vmatprep.mubr.f32.mxu0 0.0
  %10182 = vmatmul.mubr.f32.gmra.mrb[0].mxu0 %v9911
  %v10183 = vpop.f32.mrb[0].mxu0
  %v10184 = vadd.f32 0.0, %v10183
  %v10185 = vpop.f32.mrb[0].mxu0
  %10186 = vmatprep.mubr.f32.mxu0 0.0
  %10187 = vmatmul.mubr.f32.gmra.mrb[0].mxu0 %v9914
  %v10188 = vpop.f32.mrb[0].mxu0
  %v10189 = vadd.f32 0.0, %v10188
  %v10190 = vpop.f32.mrb[0].mxu0
  %10191 = vmatprep.mubr.f32.mxu0 0.0
  %10192 = vmatmul.mubr.f32.gmra.mrb[0].mxu0 %v9917
  %v10193 = vpop.f32.mrb[0].mxu0
  %v10194 = vadd.f32 0.0, %v10193
  %v10195 = vpop.f32.mrb[0].mxu0
  %10196 = vmatprep.mubr.f32.mxu0 0.0
  %10197 = vmatmul.mubr.f32.gmra.mrb[0].mxu0 %v9920
  %v10198 = vpop.f32.mrb[0].mxu0
  %v10199 = vadd.f32 0.0, %v10198
  %v10200 = vpop.f32.mrb[0].mxu0
  %10201 = vmatprep.mubr.f32.mxu0 0.0
  %10202 = vmatmul.mubr.f32.gmra.mrb[0].mxu0 %v9923
  %v10203 = vpop.f32.mrb[0].mxu0
  %v10204 = vadd.f32 0.0, %v10203
  %v10205 = vpop.f32.mrb[0].mxu0
  %10206 = vmatprep.mubr.f32.mxu0 0.0
  %10207 = vmatmul.mubr.f32.gmra.mrb[0].mxu0 %v9926
  %v10208 = vpop.f32.mrb[0].mxu0
  %v10209 = vadd.f32 0.0, %v10208
  %v10210 = vpop.f32.mrb[0].mxu0
  %10211 = vmatprep.mubr.f32.mxu0 0.0
  %10212 = vmatmul.mubr.f32.gmra.mrb[0].mxu0 %v9929
  %v10213 = vpop.f32.mrb[0].mxu0
  %v10214 = vadd.f32 0.0, %v10213
  %v10215 = vpop.f32.mrb[0].mxu0
  %10216 = vmatprep.mubr.f32.mxu0 0.0
  %10217 = vmatmul.mubr.f32.gmra.mrb[0].mxu0 %v9932
  %v10218 = vpop.f32.mrb[0].mxu0
  %v10219 = vadd.f32 0.0, %v10218
  %v10220 = vpop.f32.mrb[0].mxu0
  %10221 = vmatprep.mubr.f32.mxu0 0.0
  %10222 = vmatmul.mubr.f32.gmra.mrb[0].mxu0 %v9935
  %v10223 = vpop.f32.mrb[0].mxu0
  %v10224 = vadd.f32 0.0, %v10223
  %v10225 = vpop.f32.mrb[0].mxu0
  %10226 = vmatprep.mubr.f32.mxu0 0.0
  %10227 = vmatmul.mubr.f32.gmra.mrb[0].mxu0 %v9938
  %v10228 = vpop.f32.mrb[0].mxu0
  %v10229 = vadd.f32 0.0, %v10228
  %v10230 = vpop.f32.mrb[0].mxu0
  %10231 = vmatprep.mubr.f32.mxu0 0.0
  %10232 = vmatmul.mubr.f32.gmra.mrb[0].mxu0 %v9941
  %v10233 = vpop.f32.mrb[0].mxu0
  %v10234 = vadd.f32 0.0, %v10233
  %v10235 = vpop.f32.mrb[0].mxu0
  %10236 = vmatprep.mubr.f32.mxu0 0.0
  %10237 = vmatmul.mubr.f32.gmra.mrb[0].mxu0 %v9944
  %v10238 = vpop.f32.mrb[0].mxu0
  %v10239 = vadd.f32 0.0, %v10238
  %v10240 = vpop.f32.mrb[0].mxu0
  %10241 = vmatprep.mubr.f32.mxu0 0.0
  %10242 = vmatmul.mubr.f32.gmra.mrb[0].mxu0 %v9947
  %v10243 = vpop.f32.mrb[0].mxu0
  %v10244 = vadd.f32 0.0, %v10243
  %v10245 = vpop.f32.mrb[0].mxu0
  %10246 = vmatprep.mubr.f32.mxu0 0.0
  %10247 = vmatmul.mubr.f32.gmra.mrb[0].mxu0 %v9950
  %v10248 = vpop.f32.mrb[0].mxu0
  %v10249 = vadd.f32 0.0, %v10248
  %v10250 = vpop.f32.mrb[0].mxu0
  %10251 = vmatprep.mubr.f32.mxu0 0.0
  %10252 = vmatmul.mubr.f32.gmra.mrb[0].mxu0 %v9953
  %v10253 = vpop.f32.mrb[0].mxu0
  %v10254 = vadd.f32 0.0, %v10253
  %v10255 = vpop.f32.mrb[0].mxu0
  %10256 = vmatprep.mubr.f32.mxu0 0.0
  %10257 = vmatmul.mubr.f32.gmra.mrb[0].mxu0 %v9956
  %v10258 = vpop.f32.mrb[0].mxu0
  %v10259 = vadd.f32 0.0, %v10258
  %v10260 = vpop.f32.mrb[0].mxu0
  %10261 = vmatprep.mubr.f32.mxu0 0.0
  %10262 = vmatmul.mubr.f32.gmra.mrb[0].mxu0 %v9959
  %v10263 = vpop.f32.mrb[0].mxu0
  %v10264 = vadd.f32 0.0, %v10263
  %v10265 = vpop.f32.mrb[0].mxu0
  %10266 = vmatprep.mubr.f32.mxu0 0.0
  %10267 = vmatmul.mubr.f32.gmra.mrb[0].mxu0 %v9962
  %v10268 = vpop.f32.mrb[0].mxu0
  %v10269 = vadd.f32 0.0, %v10268
  %v10270 = vpop.f32.mrb[0].mxu0
  %10271 = vmatprep.mubr.f32.mxu0 0.0
  %10272 = vmatmul.mubr.f32.gmra.mrb[0].mxu0 %v9965
  %v10273 = vpop.f32.mrb[0].mxu0
  %v10274 = vadd.f32 0.0, %v10273
  %v10275 = vpop.f32.mrb[0].mxu0
  %10276 = vmatprep.mubr.f32.mxu0 0.0
  %10277 = vmatmul.mubr.f32.gmra.mrb[0].mxu0 %v9968
  %v10278 = vpop.f32.mrb[0].mxu0
  %v10279 = vadd.f32 0.0, %v10278
  %v10280 = vpop.f32.mrb[0].mxu0
  %10281 = vmatprep.mubr.f32.mxu0 0.0
  %10282 = vmatmul.mubr.f32.gmra.mrb[0].mxu0 %v9971
  %v10283 = vpop.f32.mrb[0].mxu0
  %v10284 = vadd.f32 0.0, %v10283
  %v10285 = vpop.f32.mrb[0].mxu0
  %10286 = vmatprep.mubr.f32.mxu0 0.0
  %10287 = vmatmul.mubr.f32.gmra.mrb[0].mxu0 %v9974
  %v10288 = vpop.f32.mrb[0].mxu0
  %v10289 = vadd.f32 0.0, %v10288
  %v10290 = vpop.f32.mrb[0].mxu0
  %10291 = vmatprep.mubr.f32.mxu0 0.0
  %10292 = vmatmul.mubr.f32.gmra.mrb[0].mxu0 %v9977
  %v10293 = vpop.f32.mrb[0].mxu0
  %v10294 = vadd.f32 0.0, %v10293
  %v10295 = vpop.f32.mrb[0].mxu0
  %10296 = vmatprep.mubr.f32.mxu0 0.0
  %10297 = vmatmul.mubr.f32.gmra.mrb[0].mxu0 %v9980
  %v10298 = vpop.f32.mrb[0].mxu0
  %v10299 = vadd.f32 0.0, %v10298
  %v10300 = vpop.f32.mrb[0].mxu0
  %10301 = vmatprep.mubr.f32.mxu0 0.0
  %10302 = vmatmul.mubr.f32.gmra.mrb[0].mxu0 %v9983
  %v10303 = vpop.f32.mrb[0].mxu0
  %v10304 = vadd.f32 0.0, %v10303
  %v10305 = vpop.f32.mrb[0].mxu0
  %10306 = vmatprep.mubr.f32.mxu0 0.0
  %10307 = vmatmul.mubr.f32.gmra.mrb[0].mxu0 %v9986
  %v10308 = vpop.f32.mrb[0].mxu0
  %v10309 = vadd.f32 0.0, %v10308
  %v10310 = vpop.f32.mrb[0].mxu0
  %10311 = vmatprep.mubr.f32.mxu0 0.0
  %10312 = vmatmul.mubr.f32.gmra.mrb[0].mxu0 %v9989
  %v10313 = vpop.f32.mrb[0].mxu0
  %v10314 = vadd.f32 0.0, %v10313
  %v10315 = vpop.f32.mrb[0].mxu0
  %10316 = vmatprep.mubr.f32.mxu0 0.0
  %10317 = vmatmul.mubr.f32.gmra.mrb[0].mxu0 %v9992
  %v10318 = vpop.f32.mrb[0].mxu0
  %v10319 = vadd.f32 0.0, %v10318
  %v10320 = vpop.f32.mrb[0].mxu0
  %10321 = vmatprep.mubr.f32.mxu0 0.0
  %10322 = vmatmul.mubr.f32.gmra.mrb[0].mxu0 %v9995
  %v10323 = vpop.f32.mrb[0].mxu0
  %v10324 = vadd.f32 0.0, %v10323
  %v10325 = vpop.f32.mrb[0].mxu0
  %10326 = vmatprep.mubr.f32.mxu0 0.0
  %10327 = vmatmul.mubr.f32.gmra.mrb[0].mxu0 %v9998
  %v10328 = vpop.f32.mrb[0].mxu0
  %v10329 = vadd.f32 0.0, %v10328
  %v10330 = vpop.f32.mrb[0].mxu0
  %10331 = vmatprep.mubr.f32.mxu0 0.0
  %10332 = vmatmul.mubr.f32.gmra.mrb[0].mxu0 %v10001
  %v10333 = vpop.f32.mrb[0].mxu0
  %v10334 = vadd.f32 0.0, %v10333
  %v10335 = vpop.f32.mrb[0].mxu0
  %10336 = vmatprep.mubr.f32.mxu0 0.0
  %10337 = vmatmul.mubr.f32.gmra.mrb[0].mxu0 %v10004
  %v10338 = vpop.f32.mrb[0].mxu0
  %v10339 = vadd.f32 0.0, %v10338
  %v10340 = vpop.f32.mrb[0].mxu0
  %10341 = vmatprep.mubr.f32.mxu0 0.0
  %10342 = vmatmul.mubr.f32.gmra.mrb[0].mxu0 %v10007
  %v10343 = vpop.f32.mrb[0].mxu0
  %v10344 = vadd.f32 0.0, %v10343
  %v10345 = vpop.f32.mrb[0].mxu0
  %10346 = vmatprep.mubr.f32.mxu0 0.0
  %10347 = vmatmul.mubr.f32.gmra.mrb[0].mxu0 %v10010
  %v10348 = vpop.f32.mrb[0].mxu0
  %v10349 = vadd.f32 0.0, %v10348
  %v10350 = vpop.f32.mrb[0].mxu0
  %10351 = vmatprep.mubr.f32.mxu0 0.0
  %10352 = vmatmul.mubr.f32.gmra.mrb[0].mxu0 %v10013
  %v10353 = vpop.f32.mrb[0].mxu0
  %v10354 = vadd.f32 0.0, %v10353
  %v10355 = vpop.f32.mrb[0].mxu0
  %10356 = vmatprep.mubr.f32.mxu0 0.0
  %10357 = vmatmul.mubr.f32.gmra.mrb[0].mxu0 %v10016
  %v10358 = vpop.f32.mrb[0].mxu0
  %v10359 = vadd.f32 0.0, %v10358
  %v10360 = vpop.f32.mrb[0].mxu0
  %10361 = vmatprep.mubr.f32.mxu0 0.0
  %10362 = vmatmul.mubr.f32.gmra.mrb[0].mxu0 %v10019
  %v10363 = vpop.f32.mrb[0].mxu0
  %v10364 = vadd.f32 0.0, %v10363
  %v10365 = vpop.f32.mrb[0].mxu0
  %10366 = vmatprep.mubr.f32.mxu0 0.0
  %10367 = vmatmul.mubr.f32.gmra.mrb[0].mxu0 %v10022
  %v10368 = vpop.f32.mrb[0].mxu0
  %v10369 = vadd.f32 0.0, %v10368
  %v10370 = vpop.f32.mrb[0].mxu0
  %10371 = vmatprep.mubr.f32.mxu0 0.0
  %10372 = vmatmul.mubr.f32.gmra.mrb[0].mxu0 %v10025
  %v10373 = vpop.f32.mrb[0].mxu0
  %v10374 = vadd.f32 0.0, %v10373
  %v10375 = vpop.f32.mrb[0].mxu0
  %10376 = vmatprep.mubr.f32.mxu0 0.0
  %10377 = vmatmul.mubr.f32.gmra.mrb[0].mxu0 %v10028
  %v10378 = vpop.f32.mrb[0].mxu0
  %v10379 = vadd.f32 0.0, %v10378
  %v10380 = vpop.f32.mrb[0].mxu0
  %10381 = vmatprep.mubr.f32.mxu0 0.0
  %10382 = vmatmul.mubr.f32.gmra.mrb[0].mxu0 %v10031
  %v10383 = vpop.f32.mrb[0].mxu0
  %v10384 = vadd.f32 0.0, %v10383
  %v10385 = vpop.f32.mrb[0].mxu0
  %10386 = vmatprep.mubr.f32.mxu0 0.0
  %10387 = vmatmul.mubr.f32.gmra.mrb[0].mxu0 %v10034
  %v10388 = vpop.f32.mrb[0].mxu0
  %v10389 = vadd.f32 0.0, %v10388
  %v10390 = vpop.f32.mrb[0].mxu0
  %10391 = vmatprep.mubr.f32.mxu0 0.0
  %10392 = vmatmul.mubr.f32.gmra.mrb[0].mxu0 %v10037
  %v10393 = vpop.f32.mrb[0].mxu0
  %v10394 = vadd.f32 0.0, %v10393
  %v10395 = vpop.f32.mrb[0].mxu0
  %10396 = vmatprep.mubr.f32.mxu0 0.0
  %10397 = vmatmul.mubr.f32.gmra.mrb[0].mxu0 %v10040
  %v10398 = vpop.f32.mrb[0].mxu0
  %v10399 = vadd.f32 0.0, %v10398
  %v10400 = vpop.f32.mrb[0].mxu0
  %10401 = vmatprep.mubr.f32.mxu0 0.0
  %10402 = vmatmul.mubr.f32.gmra.mrb[0].mxu0 %v10043
  %v10403 = vpop.f32.mrb[0].mxu0
  %v10404 = vadd.f32 0.0, %v10403
  %v10405 = vpop.f32.mrb[0].mxu0
  %10406 = vmatprep.mubr.f32.mxu0 0.0
  %10407 = vmatmul.mubr.f32.gmra.mrb[0].mxu0 %v10046
  %v10408 = vpop.f32.mrb[0].mxu0
  %v10409 = vadd.f32 0.0, %v10408
  %v10410 = vpop.f32.mrb[0].mxu0
  %10411 = vmatprep.mubr.f32.mxu0 0.0
  %10412 = vmatmul.mubr.f32.gmra.mrb[0].mxu0 %v10049
  %v10413 = vpop.f32.mrb[0].mxu0
  %v10414 = vadd.f32 0.0, %v10413
  %v10415 = vpop.f32.mrb[0].mxu0
  %10416 = vmatprep.mubr.f32.mxu0 0.0
  %10417 = vmatmul.mubr.f32.gmra.mrb[0].mxu0 %v10052
  %v10418 = vpop.f32.mrb[0].mxu0
  %v10419 = vadd.f32 0.0, %v10418
  %v10420 = vpop.f32.mrb[0].mxu0
  %10421 = vmatprep.mubr.f32.mxu0 0.0
  %10422 = vmatmul.mubr.f32.gmra.mrb[0].mxu0 %v10055
  %v10423 = vpop.f32.mrb[0].mxu0
  %v10424 = vadd.f32 0.0, %v10423
  %v10425 = vpop.f32.mrb[0].mxu0
  %10426 = vmatprep.mubr.f32.mxu0 0.0
  %10427 = vmatmul.mubr.f32.gmra.mrb[0].mxu0 %v10058
  %v10428 = vpop.f32.mrb[0].mxu0
  %v10429 = vadd.f32 0.0, %v10428
  %v10430 = vpop.f32.mrb[0].mxu0
  %10431 = vmatprep.mubr.f32.mxu0 0.0
  %10432 = vmatmul.mubr.f32.gmra.mrb[0].mxu0 %v10061
  %v10433 = vpop.f32.mrb[0].mxu0
  %v10434 = vadd.f32 0.0, %v10433
  %v10435 = vpop.f32.mrb[0].mxu0
  %10436 = vmatprep.mubr.f32.mxu0 0.0
  %10437 = vmatmul.mubr.f32.gmra.mrb[0].mxu0 %v10064
  %v10438 = vpop.f32.mrb[0].mxu0
  %v10439 = vadd.f32 0.0, %v10438
  %v10440 = vpop.f32.mrb[0].mxu0
  %10441 = vmatprep.mubr.f32.mxu0 0.0
  %10442 = vmatmul.mubr.f32.gmra.mrb[0].mxu0 %v10067
  %v10443 = vpop.f32.mrb[0].mxu0
  %v10444 = vadd.f32 0.0, %v10443
  %v10445 = vpop.f32.mrb[0].mxu0
  %10446 = vmatprep.mubr.f32.mxu0 0.0
  %10447 = vmatmul.mubr.f32.gmra.mrb[0].mxu0 %v10070
  %v10448 = vpop.f32.mrb[0].mxu0
  %v10449 = vadd.f32 0.0, %v10448
  %v10450 = vpop.f32.mrb[0].mxu0
  %10451 = vmatprep.mubr.f32.mxu0 0.0
  %10452 = vmatmul.mubr.f32.gmra.mrb[0].mxu0 %v10073
  %v10453 = vpop.f32.mrb[0].mxu0
  %v10454 = vadd.f32 0.0, %v10453
  %v10455 = vpop.f32.mrb[0].mxu0
  %10456 = vmatprep.mubr.f32.mxu0 0.0
  %10457 = vmatmul.mubr.f32.gmra.mrb[0].mxu0 %v10076
  %v10458 = vpop.f32.mrb[0].mxu0
  %v10459 = vadd.f32 0.0, %v10458
  %v10460 = vpop.f32.mrb[0].mxu0
  %10461 = vmatprep.mubr.f32.mxu0 0.0
  %10462 = vmatmul.mubr.f32.gmra.mrb[0].mxu0 %v10079
  %v10463 = vpop.f32.mrb[0].mxu0
  %v10464 = vadd.f32 0.0, %v10463
  %v10465 = vpop.f32.mrb[0].mxu0
  %10466 = vmatprep.mubr.f32.mxu0 0.0
  %10467 = vmatmul.mubr.f32.gmra.mrb[0].mxu0 %v10082
  %v10468 = vpop.f32.mrb[0].mxu0
  %v10469 = vadd.f32 0.0, %v10468
  %v10470 = vpop.f32.mrb[0].mxu0
  %10471 = vdwg.mxu0
  %v10472 = vadd.f32 %v9762, %v10154
  %v10473 = vadd.f32 %v9763, %v10159
  %v10474 = vadd.f32 %v9764, %v10164
  %v10475 = vadd.f32 %v9765, %v10169
  %v10476 = vadd.f32 %v9766, %v10174
  %v10477 = vadd.f32 %v9767, %v10179
  %v10478 = vadd.f32 %v9768, %v10184
  %v10479 = vadd.f32 %v9769, %v10189
  %v10480 = vadd.f32 %v9770, %v10194
  %v10481 = vadd.f32 %v9771, %v10199
  %v10482 = vadd.f32 %v9772, %v10204
  %v10483 = vadd.f32 %v9773, %v10209
  %v10484 = vadd.f32 %v9774, %v10214
  %v10485 = vadd.f32 %v9775, %v10219
  %v10486 = vadd.f32 %v9776, %v10224
  %v10487 = vadd.f32 %v9777, %v10229
  %v10488 = vadd.f32 %v9778, %v10234
  %v10489 = vadd.f32 %v9779, %v10239
  %v10490 = vadd.f32 %v9780, %v10244
  %v10491 = vadd.f32 %v9781, %v10249
  %v10492 = vadd.f32 %v9782, %v10254
  %v10493 = vadd.f32 %v9783, %v10259
  %v10494 = vadd.f32 %v9784, %v10264
  %v10495 = vadd.f32 %v9785, %v10269
  %v10496 = vadd.f32 %v9786, %v10274
  %v10497 = vadd.f32 %v9787, %v10279
  %v10498 = vadd.f32 %v9788, %v10284
  %v10499 = vadd.f32 %v9789, %v10289
  %v10500 = vadd.f32 %v9790, %v10294
  %v10501 = vadd.f32 %v9791, %v10299
  %v10502 = vadd.f32 %v9792, %v10304
  %v10503 = vadd.f32 %v9793, %v10309
  %v10504 = vadd.f32 %v9794, %v10314
  %v10505 = vadd.f32 %v9795, %v10319
  %v10506 = vadd.f32 %v9796, %v10324
  %v10507 = vadd.f32 %v9797, %v10329
  %v10508 = vadd.f32 %v9798, %v10334
  %v10509 = vadd.f32 %v9799, %v10339
  %v10510 = vadd.f32 %v9800, %v10344
  %v10511 = vadd.f32 %v9801, %v10349
  %v10512 = vadd.f32 %v9802, %v10354
  %v10513 = vadd.f32 %v9803, %v10359
  %v10514 = vadd.f32 %v9804, %v10364
  %v10515 = vadd.f32 %v9805, %v10369
  %v10516 = vadd.f32 %v9806, %v10374
  %v10517 = vadd.f32 %v9807, %v10379
  %v10518 = vadd.f32 %v9808, %v10384
  %v10519 = vadd.f32 %v9809, %v10389
  %v10520 = vadd.f32 %v9810, %v10394
  %v10521 = vadd.f32 %v9811, %v10399
  %v10522 = vadd.f32 %v9812, %v10404
  %v10523 = vadd.f32 %v9813, %v10409
  %v10524 = vadd.f32 %v9814, %v10414
  %v10525 = vadd.f32 %v9815, %v10419
  %v10526 = vadd.f32 %v9816, %v10424
  %v10527 = vadd.f32 %v9817, %v10429
  %v10528 = vadd.f32 %v9818, %v10434
  %v10529 = vadd.f32 %v9819, %v10439
  %v10530 = vadd.f32 %v9820, %v10444
  %v10531 = vadd.f32 %v9821, %v10449
  %v10532 = vadd.f32 %v9822, %v10454
  %v10533 = vadd.f32 %v9823, %v10459
  %v10534 = vadd.f32 %v9824, %v10464
  %v10535 = vadd.f32 %v9825, %v10469
  %v10536 = vld [vmem:[%s178 + $0x2] sm:$0xff]
  %v10537 = vld [vmem:[%s178 + $0xa] sm:$0xff]
  %v10538 = vld [vmem:[%s178 + $0x1a] sm:$0xff]
  %v10539 = vld [vmem:[%s178 + $0x22] sm:$0xff]
  %v10540 = vld [vmem:[%s178 + $0x32] sm:$0xff]
  %v10541 = vld [vmem:[%s178 + $0x3a] sm:$0xff]
  %v10542 = vld [vmem:[%s178 + $0x4a] sm:$0xff]
  %v10543 = vld [vmem:[%s178 + $0x52] sm:$0xff]
  %v10544 = vld [vmem:[%s178 + $0x62] sm:$0xff]
  %v10545 = vld [vmem:[%s178 + $0x6a] sm:$0xff]
  %v10546 = vld [vmem:[%s178 + $0x7a] sm:$0xff]
  %v10547 = vld [vmem:[%s178 + $0x82] sm:$0xff]
  %v10548 = vld [vmem:[%s178 + $0x92] sm:$0xff]
  %v10549 = vld [vmem:[%s178 + $0x9a] sm:$0xff]
  %v10550 = vld [vmem:[%s178 + $0xaa] sm:$0xff]
  %v10551 = vld [vmem:[%s178 + $0xb2] sm:$0xff]
  %v10552 = vld [vmem:[%s178 + $0xc2] sm:$0xff]
  %v10553 = vld [vmem:[%s178 + $0xca] sm:$0xff]
  %v10554 = vld [vmem:[%s178 + $0xda] sm:$0xff]
  %v10555 = vld [vmem:[%s178 + $0xe2] sm:$0xff]
  %v10556 = vld [vmem:[%s178 + $0xf2] sm:$0xff]
  %v10557 = vld [vmem:[%s178 + $0xfa] sm:$0xff]
  %v10558 = vld [vmem:[%s178 + $0x10a] sm:$0xff]
  %v10559 = vld [vmem:[%s178 + $0x112] sm:$0xff]
  %v10560 = vld [vmem:[%s178 + $0x122] sm:$0xff]
  %v10561 = vld [vmem:[%s178 + $0x12a] sm:$0xff]
  %v10562 = vld [vmem:[%s178 + $0x13a] sm:$0xff]
  %v10563 = vld [vmem:[%s178 + $0x142] sm:$0xff]
  %v10564 = vld [vmem:[%s178 + $0x152] sm:$0xff]
  %v10565 = vld [vmem:[%s178 + $0x15a] sm:$0xff]
  %v10566 = vld [vmem:[%s178 + $0x16a] sm:$0xff]
  %v10567 = vld [vmem:[%s178 + $0x172] sm:$0xff]
  %v10568 = vld [vmem:[%s178 + $0x1b2] sm:$0xff]
  %v10569 = vld [vmem:[%s178 + $0x1ba] sm:$0xff]
  %v10570 = vld [vmem:[%s178 + $0x1ca] sm:$0xff]
  %v10571 = vld [vmem:[%s178 + $0x1d2] sm:$0xff]
  %v10572 = vld [vmem:[%s178 + $0x1e2] sm:$0xff]
  %v10573 = vld [vmem:[%s178 + $0x1ea] sm:$0xff]
  %v10574 = vld [vmem:[%s178 + $0x1fa] sm:$0xff]
  %v10575 = vld [vmem:[%s178 + $0x202] sm:$0xff]
  %v10576 = vld [vmem:[%s178 + $0x212] sm:$0xff]
  %v10577 = vld [vmem:[%s178 + $0x21a] sm:$0xff]
  %v10578 = vld [vmem:[%s178 + $0x22a] sm:$0xff]
  %v10579 = vld [vmem:[%s178 + $0x232] sm:$0xff]
  %v10580 = vld [vmem:[%s178 + $0x242] sm:$0xff]
  %v10581 = vld [vmem:[%s178 + $0x24a] sm:$0xff]
  %v10582 = vld [vmem:[%s178 + $0x25a] sm:$0xff]
  %v10583 = vld [vmem:[%s178 + $0x262] sm:$0xff]
  %v10584 = vld [vmem:[%s178 + $0x272] sm:$0xff]
  %v10585 = vld [vmem:[%s178 + $0x27a] sm:$0xff]
  %v10586 = vld [vmem:[%s178 + $0x28a] sm:$0xff]
  %v10587 = vld [vmem:[%s178 + $0x292] sm:$0xff]
  %v10588 = vld [vmem:[%s178 + $0x2a2] sm:$0xff]
  %v10589 = vld [vmem:[%s178 + $0x2aa] sm:$0xff]
  %v10590 = vld [vmem:[%s178 + $0x2ba] sm:$0xff]
  %v10591 = vld [vmem:[%s178 + $0x2c2] sm:$0xff]
  %v10592 = vld [vmem:[%s178 + $0x2d2] sm:$0xff]
  %v10593 = vld [vmem:[%s178 + $0x2da] sm:$0xff]
  %v10594 = vld [vmem:[%s178 + $0x2ea] sm:$0xff]
  %v10595 = vld [vmem:[%s178 + $0x2f2] sm:$0xff]
  %v10596 = vld [vmem:[%s178 + $0x302] sm:$0xff]
  %v10597 = vld [vmem:[%s178 + $0x30a] sm:$0xff]
  %v10598 = vld [vmem:[%s178 + $0x31a] sm:$0xff]
  %v10599 = vld [vmem:[%s178 + $0x322] sm:$0xff]
  %s10600 = scalar_lea.vmem %s4, 20
  %v10601 = vld [vmem:[%s10600] sm:$0xf]
  %v10603 = vsel %vm26, %v10536, 0
  %v10606 = vsel %vm26, %v10537, 0
  %v10609 = vsel %vm26, %v10538, 0
  %v10612 = vsel %vm26, %v10539, 0
  %v10615 = vsel %vm26, %v10540, 0
  %v10618 = vsel %vm26, %v10541, 0
  %v10621 = vsel %vm26, %v10542, 0
  %v10624 = vsel %vm26, %v10543, 0
  %v10627 = vsel %vm26, %v10544, 0
  %v10630 = vsel %vm26, %v10545, 0
  %v10633 = vsel %vm26, %v10546, 0
  %v10636 = vsel %vm26, %v10547, 0
  %v10639 = vsel %vm26, %v10548, 0
  %v10642 = vsel %vm26, %v10549, 0
  %v10645 = vsel %vm26, %v10550, 0
  %v10648 = vsel %vm26, %v10551, 0
  %v10651 = vsel %vm26, %v10552, 0
  %v10654 = vsel %vm26, %v10553, 0
  %v10657 = vsel %vm26, %v10554, 0
  %v10660 = vsel %vm26, %v10555, 0
  %v10663 = vsel %vm26, %v10556, 0
  %v10666 = vsel %vm26, %v10557, 0
  %v10669 = vsel %vm26, %v10558, 0
  %v10672 = vsel %vm26, %v10559, 0
  %v10675 = vsel %vm26, %v10560, 0
  %v10678 = vsel %vm26, %v10561, 0
  %v10681 = vsel %vm26, %v10562, 0
  %v10684 = vsel %vm26, %v10563, 0
  %v10687 = vsel %vm26, %v10564, 0
  %v10690 = vsel %vm26, %v10565, 0
  %v10693 = vsel %vm26, %v10566, 0
  %v10696 = vsel %vm26, %v10567, 0
  %v10699 = vsel %vm26, %v10568, 0
  %v10702 = vsel %vm26, %v10569, 0
  %v10705 = vsel %vm26, %v10570, 0
  %v10708 = vsel %vm26, %v10571, 0
  %v10711 = vsel %vm26, %v10572, 0
  %v10714 = vsel %vm26, %v10573, 0
  %v10717 = vsel %vm26, %v10574, 0
  %v10720 = vsel %vm26, %v10575, 0
  %v10723 = vsel %vm26, %v10576, 0
  %v10726 = vsel %vm26, %v10577, 0
  %v10729 = vsel %vm26, %v10578, 0
  %v10732 = vsel %vm26, %v10579, 0
  %v10735 = vsel %vm26, %v10580, 0
  %v10738 = vsel %vm26, %v10581, 0
  %v10741 = vsel %vm26, %v10582, 0
  %v10744 = vsel %vm26, %v10583, 0
  %v10747 = vsel %vm26, %v10584, 0
  %v10750 = vsel %vm26, %v10585, 0
  %v10753 = vsel %vm26, %v10586, 0
  %v10756 = vsel %vm26, %v10587, 0
  %v10759 = vsel %vm26, %v10588, 0
  %v10762 = vsel %vm26, %v10589, 0
  %v10765 = vsel %vm26, %v10590, 0
  %v10768 = vsel %vm26, %v10591, 0
  %v10771 = vsel %vm26, %v10592, 0
  %v10774 = vsel %vm26, %v10593, 0
  %v10777 = vsel %vm26, %v10594, 0
  %v10780 = vsel %vm26, %v10595, 0
  %v10783 = vsel %vm26, %v10596, 0
  %v10786 = vsel %vm26, %v10597, 0
  %v10789 = vsel %vm26, %v10598, 0
  %v10792 = vsel %vm26, %v10599, 0
  %v10795 = vsel %vm566, %v10601, 0
  %10797 = vmatprep.subr.mxu0 0.0
  %10798 = vmatpush1.msra.mxu0 %v10795
  %10799 = vmatprep.subr.mxu0 0.0
  %10800 = vmatpush1.msra.mxu0 0.0
  %10801 = vmatprep.subr.mxu0 0.0
  %10802 = vmatpush1.msra.mxu0 0.0
  %10803 = vmatprep.subr.mxu0 0.0
  %10804 = vmatpush1.msra.mxu0 0.0
  %10805 = vmatprep.subr.mxu0 0.0
  %10806 = vmatpush1.msra.mxu0 0.0
  %10807 = vmatprep.subr.mxu0 0.0
  %10808 = vmatpush1.msra.mxu0 0.0
  %10809 = vmatprep.subr.mxu0 0.0
  %10810 = vmatpush1.msra.mxu0 0.0
  %10811 = vmatprep.subr.mxu0 0.0
  %10812 = vmatpush1.msra.mxu0 0.0
  %10813 = vmatprep.subr.mxu0 0.0
  %10814 = vmatpush1.msra.mxu0 0.0
  %10815 = vmatprep.subr.mxu0 0.0
  %10816 = vmatpush1.msra.mxu0 0.0
  %10817 = vmatprep.subr.mxu0 0.0
  %10818 = vmatpush1.msra.mxu0 0.0
  %10819 = vmatprep.subr.mxu0 0.0
  %10820 = vmatpush1.msra.mxu0 0.0
  %10821 = vmatprep.subr.mxu0 0.0
  %10822 = vmatpush1.msra.mxu0 0.0
  %10823 = vmatprep.subr.mxu0 0.0
  %10824 = vmatpush1.msra.mxu0 0.0
  %10825 = vmatprep.subr.mxu0 0.0
  %10826 = vmatpush1.msra.mxu0 0.0
  %10827 = vmatprep.subr.mxu0 0.0
  %10828 = vmatpush1.msra.mxu0 0.0
  %10829 = vmatprep.subr.mxu0 0.0
  %10830 = vmatpush1.msra.mxu0 0.0
  %10831 = vmatprep.subr.mxu0 0.0
  %10832 = vmatpush1.msra.mxu0 0.0
  %10833 = vmatprep.subr.mxu0 0.0
  %10834 = vmatpush1.msra.mxu0 0.0
  %10835 = vmatprep.subr.mxu0 0.0
  %10836 = vmatpush1.msra.mxu0 0.0
  %10837 = vmatprep.subr.mxu0 0.0
  %10838 = vmatpush1.msra.mxu0 0.0
  %10839 = vmatprep.subr.mxu0 0.0
  %10840 = vmatpush1.msra.mxu0 0.0
  %10841 = vmatprep.subr.mxu0 0.0
  %10842 = vmatpush1.msra.mxu0 0.0
  %10843 = vmatprep.subr.mxu0 0.0
  %10844 = vmatpush1.msra.mxu0 0.0
  %10845 = vmatprep.subr.mxu0 0.0
  %10846 = vmatpush1.msra.mxu0 0.0
  %10847 = vmatprep.subr.mxu0 0.0
  %10848 = vmatpush1.msra.mxu0 0.0
  %10849 = vmatprep.subr.mxu0 0.0
  %10850 = vmatpush1.msra.mxu0 0.0
  %10851 = vmatprep.subr.mxu0 0.0
  %10852 = vmatpush1.msra.mxu0 0.0
  %10853 = vmatprep.subr.mxu0 0.0
  %10854 = vmatpush1.msra.mxu0 0.0
  %10855 = vmatprep.subr.mxu0 0.0
  %10856 = vmatpush1.msra.mxu0 0.0
  %10857 = vmatprep.subr.mxu0 0.0
  %10858 = vmatpush1.msra.mxu0 0.0
  %10859 = vmatprep.subr.mxu0 0.0
  %10860 = vmatpush1.msra.mxu0 0.0
  %10861 = vmatprep.mubr.f32.mxu0 0.0
  %10862 = vmatmul.mubr.f32.gmra.mrb[0].mxu0 %v10603
  %v10863 = vpop.f32.mrb[0].mxu0
  %v10864 = vadd.f32 0.0, %v10863
  %v10865 = vpop.f32.mrb[0].mxu0
  %10866 = vmatprep.mubr.f32.mxu0 0.0
  %10867 = vmatmul.mubr.f32.gmra.mrb[0].mxu0 %v10606
  %v10868 = vpop.f32.mrb[0].mxu0
  %v10869 = vadd.f32 0.0, %v10868
  %v10870 = vpop.f32.mrb[0].mxu0
  %10871 = vmatprep.mubr.f32.mxu0 0.0
  %10872 = vmatmul.mubr.f32.gmra.mrb[0].mxu0 %v10609
  %v10873 = vpop.f32.mrb[0].mxu0
  %v10874 = vadd.f32 0.0, %v10873
  %v10875 = vpop.f32.mrb[0].mxu0
  %10876 = vmatprep.mubr.f32.mxu0 0.0
  %10877 = vmatmul.mubr.f32.gmra.mrb[0].mxu0 %v10612
  %v10878 = vpop.f32.mrb[0].mxu0
  %v10879 = vadd.f32 0.0, %v10878
  %v10880 = vpop.f32.mrb[0].mxu0
  %10881 = vmatprep.mubr.f32.mxu0 0.0
  %10882 = vmatmul.mubr.f32.gmra.mrb[0].mxu0 %v10615
  %v10883 = vpop.f32.mrb[0].mxu0
  %v10884 = vadd.f32 0.0, %v10883
  %v10885 = vpop.f32.mrb[0].mxu0
  %10886 = vmatprep.mubr.f32.mxu0 0.0
  %10887 = vmatmul.mubr.f32.gmra.mrb[0].mxu0 %v10618
  %v10888 = vpop.f32.mrb[0].mxu0
  %v10889 = vadd.f32 0.0, %v10888
  %v10890 = vpop.f32.mrb[0].mxu0
  %10891 = vmatprep.mubr.f32.mxu0 0.0
  %10892 = vmatmul.mubr.f32.gmra.mrb[0].mxu0 %v10621
  %v10893 = vpop.f32.mrb[0].mxu0
  %v10894 = vadd.f32 0.0, %v10893
  %v10895 = vpop.f32.mrb[0].mxu0
  %10896 = vmatprep.mubr.f32.mxu0 0.0
  %10897 = vmatmul.mubr.f32.gmra.mrb[0].mxu0 %v10624
  %v10898 = vpop.f32.mrb[0].mxu0
  %v10899 = vadd.f32 0.0, %v10898
  %v10900 = vpop.f32.mrb[0].mxu0
  %10901 = vmatprep.mubr.f32.mxu0 0.0
  %10902 = vmatmul.mubr.f32.gmra.mrb[0].mxu0 %v10627
  %v10903 = vpop.f32.mrb[0].mxu0
  %v10904 = vadd.f32 0.0, %v10903
  %v10905 = vpop.f32.mrb[0].mxu0
  %10906 = vmatprep.mubr.f32.mxu0 0.0
  %10907 = vmatmul.mubr.f32.gmra.mrb[0].mxu0 %v10630
  %v10908 = vpop.f32.mrb[0].mxu0
  %v10909 = vadd.f32 0.0, %v10908
  %v10910 = vpop.f32.mrb[0].mxu0
  %10911 = vmatprep.mubr.f32.mxu0 0.0
  %10912 = vmatmul.mubr.f32.gmra.mrb[0].mxu0 %v10633
  %v10913 = vpop.f32.mrb[0].mxu0
  %v10914 = vadd.f32 0.0, %v10913
  %v10915 = vpop.f32.mrb[0].mxu0
  %10916 = vmatprep.mubr.f32.mxu0 0.0
  %10917 = vmatmul.mubr.f32.gmra.mrb[0].mxu0 %v10636
  %v10918 = vpop.f32.mrb[0].mxu0
  %v10919 = vadd.f32 0.0, %v10918
  %v10920 = vpop.f32.mrb[0].mxu0
  %10921 = vmatprep.mubr.f32.mxu0 0.0
  %10922 = vmatmul.mubr.f32.gmra.mrb[0].mxu0 %v10639
  %v10923 = vpop.f32.mrb[0].mxu0
  %v10924 = vadd.f32 0.0, %v10923
  %v10925 = vpop.f32.mrb[0].mxu0
  %10926 = vmatprep.mubr.f32.mxu0 0.0
  %10927 = vmatmul.mubr.f32.gmra.mrb[0].mxu0 %v10642
  %v10928 = vpop.f32.mrb[0].mxu0
  %v10929 = vadd.f32 0.0, %v10928
  %v10930 = vpop.f32.mrb[0].mxu0
  %10931 = vmatprep.mubr.f32.mxu0 0.0
  %10932 = vmatmul.mubr.f32.gmra.mrb[0].mxu0 %v10645
  %v10933 = vpop.f32.mrb[0].mxu0
  %v10934 = vadd.f32 0.0, %v10933
  %v10935 = vpop.f32.mrb[0].mxu0
  %10936 = vmatprep.mubr.f32.mxu0 0.0
  %10937 = vmatmul.mubr.f32.gmra.mrb[0].mxu0 %v10648
  %v10938 = vpop.f32.mrb[0].mxu0
  %v10939 = vadd.f32 0.0, %v10938
  %v10940 = vpop.f32.mrb[0].mxu0
  %10941 = vmatprep.mubr.f32.mxu0 0.0
  %10942 = vmatmul.mubr.f32.gmra.mrb[0].mxu0 %v10651
  %v10943 = vpop.f32.mrb[0].mxu0
  %v10944 = vadd.f32 0.0, %v10943
  %v10945 = vpop.f32.mrb[0].mxu0
  %10946 = vmatprep.mubr.f32.mxu0 0.0
  %10947 = vmatmul.mubr.f32.gmra.mrb[0].mxu0 %v10654
  %v10948 = vpop.f32.mrb[0].mxu0
  %v10949 = vadd.f32 0.0, %v10948
  %v10950 = vpop.f32.mrb[0].mxu0
  %10951 = vmatprep.mubr.f32.mxu0 0.0
  %10952 = vmatmul.mubr.f32.gmra.mrb[0].mxu0 %v10657
  %v10953 = vpop.f32.mrb[0].mxu0
  %v10954 = vadd.f32 0.0, %v10953
  %v10955 = vpop.f32.mrb[0].mxu0
  %10956 = vmatprep.mubr.f32.mxu0 0.0
  %10957 = vmatmul.mubr.f32.gmra.mrb[0].mxu0 %v10660
  %v10958 = vpop.f32.mrb[0].mxu0
  %v10959 = vadd.f32 0.0, %v10958
  %v10960 = vpop.f32.mrb[0].mxu0
  %10961 = vmatprep.mubr.f32.mxu0 0.0
  %10962 = vmatmul.mubr.f32.gmra.mrb[0].mxu0 %v10663
  %v10963 = vpop.f32.mrb[0].mxu0
  %v10964 = vadd.f32 0.0, %v10963
  %v10965 = vpop.f32.mrb[0].mxu0
  %10966 = vmatprep.mubr.f32.mxu0 0.0
  %10967 = vmatmul.mubr.f32.gmra.mrb[0].mxu0 %v10666
  %v10968 = vpop.f32.mrb[0].mxu0
  %v10969 = vadd.f32 0.0, %v10968
  %v10970 = vpop.f32.mrb[0].mxu0
  %10971 = vmatprep.mubr.f32.mxu0 0.0
  %10972 = vmatmul.mubr.f32.gmra.mrb[0].mxu0 %v10669
  %v10973 = vpop.f32.mrb[0].mxu0
  %v10974 = vadd.f32 0.0, %v10973
  %v10975 = vpop.f32.mrb[0].mxu0
  %10976 = vmatprep.mubr.f32.mxu0 0.0
  %10977 = vmatmul.mubr.f32.gmra.mrb[0].mxu0 %v10672
  %v10978 = vpop.f32.mrb[0].mxu0
  %v10979 = vadd.f32 0.0, %v10978
  %v10980 = vpop.f32.mrb[0].mxu0
  %10981 = vmatprep.mubr.f32.mxu0 0.0
  %10982 = vmatmul.mubr.f32.gmra.mrb[0].mxu0 %v10675
  %v10983 = vpop.f32.mrb[0].mxu0
  %v10984 = vadd.f32 0.0, %v10983
  %v10985 = vpop.f32.mrb[0].mxu0
  %10986 = vmatprep.mubr.f32.mxu0 0.0
  %10987 = vmatmul.mubr.f32.gmra.mrb[0].mxu0 %v10678
  %v10988 = vpop.f32.mrb[0].mxu0
  %v10989 = vadd.f32 0.0, %v10988
  %v10990 = vpop.f32.mrb[0].mxu0
  %10991 = vmatprep.mubr.f32.mxu0 0.0
  %10992 = vmatmul.mubr.f32.gmra.mrb[0].mxu0 %v10681
  %v10993 = vpop.f32.mrb[0].mxu0
  %v10994 = vadd.f32 0.0, %v10993
  %v10995 = vpop.f32.mrb[0].mxu0
  %10996 = vmatprep.mubr.f32.mxu0 0.0
  %10997 = vmatmul.mubr.f32.gmra.mrb[0].mxu0 %v10684
  %v10998 = vpop.f32.mrb[0].mxu0
  %v10999 = vadd.f32 0.0, %v10998
  %v11000 = vpop.f32.mrb[0].mxu0
  %11001 = vmatprep.mubr.f32.mxu0 0.0
  %11002 = vmatmul.mubr.f32.gmra.mrb[0].mxu0 %v10687
  %v11003 = vpop.f32.mrb[0].mxu0
  %v11004 = vadd.f32 0.0, %v11003
  %v11005 = vpop.f32.mrb[0].mxu0
  %11006 = vmatprep.mubr.f32.mxu0 0.0
  %11007 = vmatmul.mubr.f32.gmra.mrb[0].mxu0 %v10690
  %v11008 = vpop.f32.mrb[0].mxu0
  %v11009 = vadd.f32 0.0, %v11008
  %v11010 = vpop.f32.mrb[0].mxu0
  %11011 = vmatprep.mubr.f32.mxu0 0.0
  %11012 = vmatmul.mubr.f32.gmra.mrb[0].mxu0 %v10693
  %v11013 = vpop.f32.mrb[0].mxu0
  %v11014 = vadd.f32 0.0, %v11013
  %v11015 = vpop.f32.mrb[0].mxu0
  %11016 = vmatprep.mubr.f32.mxu0 0.0
  %11017 = vmatmul.mubr.f32.gmra.mrb[0].mxu0 %v10696
  %v11018 = vpop.f32.mrb[0].mxu0
  %v11019 = vadd.f32 0.0, %v11018
  %v11020 = vpop.f32.mrb[0].mxu0
  %11021 = vmatprep.mubr.f32.mxu0 0.0
  %11022 = vmatmul.mubr.f32.gmra.mrb[0].mxu0 %v10699
  %v11023 = vpop.f32.mrb[0].mxu0
  %v11024 = vadd.f32 0.0, %v11023
  %v11025 = vpop.f32.mrb[0].mxu0
  %11026 = vmatprep.mubr.f32.mxu0 0.0
  %11027 = vmatmul.mubr.f32.gmra.mrb[0].mxu0 %v10702
  %v11028 = vpop.f32.mrb[0].mxu0
  %v11029 = vadd.f32 0.0, %v11028
  %v11030 = vpop.f32.mrb[0].mxu0
  %11031 = vmatprep.mubr.f32.mxu0 0.0
  %11032 = vmatmul.mubr.f32.gmra.mrb[0].mxu0 %v10705
  %v11033 = vpop.f32.mrb[0].mxu0
  %v11034 = vadd.f32 0.0, %v11033
  %v11035 = vpop.f32.mrb[0].mxu0
  %11036 = vmatprep.mubr.f32.mxu0 0.0
  %11037 = vmatmul.mubr.f32.gmra.mrb[0].mxu0 %v10708
  %v11038 = vpop.f32.mrb[0].mxu0
  %v11039 = vadd.f32 0.0, %v11038
  %v11040 = vpop.f32.mrb[0].mxu0
  %11041 = vmatprep.mubr.f32.mxu0 0.0
  %11042 = vmatmul.mubr.f32.gmra.mrb[0].mxu0 %v10711
  %v11043 = vpop.f32.mrb[0].mxu0
  %v11044 = vadd.f32 0.0, %v11043
  %v11045 = vpop.f32.mrb[0].mxu0
  %11046 = vmatprep.mubr.f32.mxu0 0.0
  %11047 = vmatmul.mubr.f32.gmra.mrb[0].mxu0 %v10714
  %v11048 = vpop.f32.mrb[0].mxu0
  %v11049 = vadd.f32 0.0, %v11048
  %v11050 = vpop.f32.mrb[0].mxu0
  %11051 = vmatprep.mubr.f32.mxu0 0.0
  %11052 = vmatmul.mubr.f32.gmra.mrb[0].mxu0 %v10717
  %v11053 = vpop.f32.mrb[0].mxu0
  %v11054 = vadd.f32 0.0, %v11053
  %v11055 = vpop.f32.mrb[0].mxu0
  %11056 = vmatprep.mubr.f32.mxu0 0.0
  %11057 = vmatmul.mubr.f32.gmra.mrb[0].mxu0 %v10720
  %v11058 = vpop.f32.mrb[0].mxu0
  %v11059 = vadd.f32 0.0, %v11058
  %v11060 = vpop.f32.mrb[0].mxu0
  %11061 = vmatprep.mubr.f32.mxu0 0.0
  %11062 = vmatmul.mubr.f32.gmra.mrb[0].mxu0 %v10723
  %v11063 = vpop.f32.mrb[0].mxu0
  %v11064 = vadd.f32 0.0, %v11063
  %v11065 = vpop.f32.mrb[0].mxu0
  %11066 = vmatprep.mubr.f32.mxu0 0.0
  %11067 = vmatmul.mubr.f32.gmra.mrb[0].mxu0 %v10726
  %v11068 = vpop.f32.mrb[0].mxu0
  %v11069 = vadd.f32 0.0, %v11068
  %v11070 = vpop.f32.mrb[0].mxu0
  %11071 = vmatprep.mubr.f32.mxu0 0.0
  %11072 = vmatmul.mubr.f32.gmra.mrb[0].mxu0 %v10729
  %v11073 = vpop.f32.mrb[0].mxu0
  %v11074 = vadd.f32 0.0, %v11073
  %v11075 = vpop.f32.mrb[0].mxu0
  %11076 = vmatprep.mubr.f32.mxu0 0.0
  %11077 = vmatmul.mubr.f32.gmra.mrb[0].mxu0 %v10732
  %v11078 = vpop.f32.mrb[0].mxu0
  %v11079 = vadd.f32 0.0, %v11078
  %v11080 = vpop.f32.mrb[0].mxu0
  %11081 = vmatprep.mubr.f32.mxu0 0.0
  %11082 = vmatmul.mubr.f32.gmra.mrb[0].mxu0 %v10735
  %v11083 = vpop.f32.mrb[0].mxu0
  %v11084 = vadd.f32 0.0, %v11083
  %v11085 = vpop.f32.mrb[0].mxu0
  %11086 = vmatprep.mubr.f32.mxu0 0.0
  %11087 = vmatmul.mubr.f32.gmra.mrb[0].mxu0 %v10738
  %v11088 = vpop.f32.mrb[0].mxu0
  %v11089 = vadd.f32 0.0, %v11088
  %v11090 = vpop.f32.mrb[0].mxu0
  %11091 = vmatprep.mubr.f32.mxu0 0.0
  %11092 = vmatmul.mubr.f32.gmra.mrb[0].mxu0 %v10741
  %v11093 = vpop.f32.mrb[0].mxu0
  %v11094 = vadd.f32 0.0, %v11093
  %v11095 = vpop.f32.mrb[0].mxu0
  %11096 = vmatprep.mubr.f32.mxu0 0.0
  %11097 = vmatmul.mubr.f32.gmra.mrb[0].mxu0 %v10744
  %v11098 = vpop.f32.mrb[0].mxu0
  %v11099 = vadd.f32 0.0, %v11098
  %v11100 = vpop.f32.mrb[0].mxu0
  %11101 = vmatprep.mubr.f32.mxu0 0.0
  %11102 = vmatmul.mubr.f32.gmra.mrb[0].mxu0 %v10747
  %v11103 = vpop.f32.mrb[0].mxu0
  %v11104 = vadd.f32 0.0, %v11103
  %v11105 = vpop.f32.mrb[0].mxu0
  %11106 = vmatprep.mubr.f32.mxu0 0.0
  %11107 = vmatmul.mubr.f32.gmra.mrb[0].mxu0 %v10750
  %v11108 = vpop.f32.mrb[0].mxu0
  %v11109 = vadd.f32 0.0, %v11108
  %v11110 = vpop.f32.mrb[0].mxu0
  %11111 = vmatprep.mubr.f32.mxu0 0.0
  %11112 = vmatmul.mubr.f32.gmra.mrb[0].mxu0 %v10753
  %v11113 = vpop.f32.mrb[0].mxu0
  %v11114 = vadd.f32 0.0, %v11113
  %v11115 = vpop.f32.mrb[0].mxu0
  %11116 = vmatprep.mubr.f32.mxu0 0.0
  %11117 = vmatmul.mubr.f32.gmra.mrb[0].mxu0 %v10756
  %v11118 = vpop.f32.mrb[0].mxu0
  %v11119 = vadd.f32 0.0, %v11118
  %v11120 = vpop.f32.mrb[0].mxu0
  %11121 = vmatprep.mubr.f32.mxu0 0.0
  %11122 = vmatmul.mubr.f32.gmra.mrb[0].mxu0 %v10759
  %v11123 = vpop.f32.mrb[0].mxu0
  %v11124 = vadd.f32 0.0, %v11123
  %v11125 = vpop.f32.mrb[0].mxu0
  %11126 = vmatprep.mubr.f32.mxu0 0.0
  %11127 = vmatmul.mubr.f32.gmra.mrb[0].mxu0 %v10762
  %v11128 = vpop.f32.mrb[0].mxu0
  %v11129 = vadd.f32 0.0, %v11128
  %v11130 = vpop.f32.mrb[0].mxu0
  %11131 = vmatprep.mubr.f32.mxu0 0.0
  %11132 = vmatmul.mubr.f32.gmra.mrb[0].mxu0 %v10765
  %v11133 = vpop.f32.mrb[0].mxu0
  %v11134 = vadd.f32 0.0, %v11133
  %v11135 = vpop.f32.mrb[0].mxu0
  %11136 = vmatprep.mubr.f32.mxu0 0.0
  %11137 = vmatmul.mubr.f32.gmra.mrb[0].mxu0 %v10768
  %v11138 = vpop.f32.mrb[0].mxu0
  %v11139 = vadd.f32 0.0, %v11138
  %v11140 = vpop.f32.mrb[0].mxu0
  %11141 = vmatprep.mubr.f32.mxu0 0.0
  %11142 = vmatmul.mubr.f32.gmra.mrb[0].mxu0 %v10771
  %v11143 = vpop.f32.mrb[0].mxu0
  %v11144 = vadd.f32 0.0, %v11143
  %v11145 = vpop.f32.mrb[0].mxu0
  %11146 = vmatprep.mubr.f32.mxu0 0.0
  %11147 = vmatmul.mubr.f32.gmra.mrb[0].mxu0 %v10774
  %v11148 = vpop.f32.mrb[0].mxu0
  %v11149 = vadd.f32 0.0, %v11148
  %v11150 = vpop.f32.mrb[0].mxu0
  %11151 = vmatprep.mubr.f32.mxu0 0.0
  %11152 = vmatmul.mubr.f32.gmra.mrb[0].mxu0 %v10777
  %v11153 = vpop.f32.mrb[0].mxu0
  %v11154 = vadd.f32 0.0, %v11153
  %v11155 = vpop.f32.mrb[0].mxu0
  %11156 = vmatprep.mubr.f32.mxu0 0.0
  %11157 = vmatmul.mubr.f32.gmra.mrb[0].mxu0 %v10780
  %v11158 = vpop.f32.mrb[0].mxu0
  %v11159 = vadd.f32 0.0, %v11158
  %v11160 = vpop.f32.mrb[0].mxu0
  %11161 = vmatprep.mubr.f32.mxu0 0.0
  %11162 = vmatmul.mubr.f32.gmra.mrb[0].mxu0 %v10783
  %v11163 = vpop.f32.mrb[0].mxu0
  %v11164 = vadd.f32 0.0, %v11163
  %v11165 = vpop.f32.mrb[0].mxu0
  %11166 = vmatprep.mubr.f32.mxu0 0.0
  %11167 = vmatmul.mubr.f32.gmra.mrb[0].mxu0 %v10786
  %v11168 = vpop.f32.mrb[0].mxu0
  %v11169 = vadd.f32 0.0, %v11168
  %v11170 = vpop.f32.mrb[0].mxu0
  %11171 = vmatprep.mubr.f32.mxu0 0.0
  %11172 = vmatmul.mubr.f32.gmra.mrb[0].mxu0 %v10789
  %v11173 = vpop.f32.mrb[0].mxu0
  %v11174 = vadd.f32 0.0, %v11173
  %v11175 = vpop.f32.mrb[0].mxu0
  %11176 = vmatprep.mubr.f32.mxu0 0.0
  %11177 = vmatmul.mubr.f32.gmra.mrb[0].mxu0 %v10792
  %v11178 = vpop.f32.mrb[0].mxu0
  %v11179 = vadd.f32 0.0, %v11178
  %v11180 = vpop.f32.mrb[0].mxu0
  %11181 = vdwg.mxu0
  %v11182 = vadd.f32 %v10472, %v10864
  %v11183 = vadd.f32 %v10473, %v10869
  %v11184 = vadd.f32 %v10474, %v10874
  %v11185 = vadd.f32 %v10475, %v10879
  %v11186 = vadd.f32 %v10476, %v10884
  %v11187 = vadd.f32 %v10477, %v10889
  %v11188 = vadd.f32 %v10478, %v10894
  %v11189 = vadd.f32 %v10479, %v10899
  %v11190 = vadd.f32 %v10480, %v10904
  %v11191 = vadd.f32 %v10481, %v10909
  %v11192 = vadd.f32 %v10482, %v10914
  %v11193 = vadd.f32 %v10483, %v10919
  %v11194 = vadd.f32 %v10484, %v10924
  %v11195 = vadd.f32 %v10485, %v10929
  %v11196 = vadd.f32 %v10486, %v10934
  %v11197 = vadd.f32 %v10487, %v10939
  %v11198 = vadd.f32 %v10488, %v10944
  %v11199 = vadd.f32 %v10489, %v10949
  %v11200 = vadd.f32 %v10490, %v10954
  %v11201 = vadd.f32 %v10491, %v10959
  %v11202 = vadd.f32 %v10492, %v10964
  %v11203 = vadd.f32 %v10493, %v10969
  %v11204 = vadd.f32 %v10494, %v10974
  %v11205 = vadd.f32 %v10495, %v10979
  %v11206 = vadd.f32 %v10496, %v10984
  %v11207 = vadd.f32 %v10497, %v10989
  %v11208 = vadd.f32 %v10498, %v10994
  %v11209 = vadd.f32 %v10499, %v10999
  %v11210 = vadd.f32 %v10500, %v11004
  %v11211 = vadd.f32 %v10501, %v11009
  %v11212 = vadd.f32 %v10502, %v11014
  %v11213 = vadd.f32 %v10503, %v11019
  %v11214 = vadd.f32 %v10504, %v11024
  %v11215 = vadd.f32 %v10505, %v11029
  %v11216 = vadd.f32 %v10506, %v11034
  %v11217 = vadd.f32 %v10507, %v11039
  %v11218 = vadd.f32 %v10508, %v11044
  %v11219 = vadd.f32 %v10509, %v11049
  %v11220 = vadd.f32 %v10510, %v11054
  %v11221 = vadd.f32 %v10511, %v11059
  %v11222 = vadd.f32 %v10512, %v11064
  %v11223 = vadd.f32 %v10513, %v11069
  %v11224 = vadd.f32 %v10514, %v11074
  %v11225 = vadd.f32 %v10515, %v11079
  %v11226 = vadd.f32 %v10516, %v11084
  %v11227 = vadd.f32 %v10517, %v11089
  %v11228 = vadd.f32 %v10518, %v11094
  %v11229 = vadd.f32 %v10519, %v11099
  %v11230 = vadd.f32 %v10520, %v11104
  %v11231 = vadd.f32 %v10521, %v11109
  %v11232 = vadd.f32 %v10522, %v11114
  %v11233 = vadd.f32 %v10523, %v11119
  %v11234 = vadd.f32 %v10524, %v11124
  %v11235 = vadd.f32 %v10525, %v11129
  %v11236 = vadd.f32 %v10526, %v11134
  %v11237 = vadd.f32 %v10527, %v11139
  %v11238 = vadd.f32 %v10528, %v11144
  %v11239 = vadd.f32 %v10529, %v11149
  %v11240 = vadd.f32 %v10530, %v11154
  %v11241 = vadd.f32 %v10531, %v11159
  %v11242 = vadd.f32 %v10532, %v11164
  %v11243 = vadd.f32 %v10533, %v11169
  %v11244 = vadd.f32 %v10534, %v11174
  %v11245 = vadd.f32 %v10535, %v11179
  %v11246 = vld [vmem:[%s4375] sm:$0xff]
  %v11247 = vld [vmem:[%s4375 + $0x8] sm:$0xff]
  %v11248 = vld [vmem:[%s4375 + $0x18] sm:$0xff]
  %v11249 = vld [vmem:[%s4375 + $0x20] sm:$0xff]
  %v11250 = vld [vmem:[%s4375 + $0x30] sm:$0xff]
  %v11251 = vld [vmem:[%s4375 + $0x38] sm:$0xff]
  %v11252 = vld [vmem:[%s4375 + $0x48] sm:$0xff]
  %v11253 = vld [vmem:[%s4375 + $0x50] sm:$0xff]
  %v11254 = vld [vmem:[%s4375 + $0x60] sm:$0xff]
  %v11255 = vld [vmem:[%s4375 + $0x68] sm:$0xff]
  %v11256 = vld [vmem:[%s4375 + $0x78] sm:$0xff]
  %v11257 = vld [vmem:[%s4375 + $0x80] sm:$0xff]
  %v11258 = vld [vmem:[%s4375 + $0x90] sm:$0xff]
  %v11259 = vld [vmem:[%s4375 + $0x98] sm:$0xff]
  %v11260 = vld [vmem:[%s4375 + $0xa8] sm:$0xff]
  %v11261 = vld [vmem:[%s4375 + $0xb0] sm:$0xff]
  %v11262 = vld [vmem:[%s4375 + $0xc0] sm:$0xff]
  %v11263 = vld [vmem:[%s4375 + $0xc8] sm:$0xff]
  %v11264 = vld [vmem:[%s4375 + $0xd8] sm:$0xff]
  %v11265 = vld [vmem:[%s4375 + $0xe0] sm:$0xff]
  %v11266 = vld [vmem:[%s4375 + $0xf0] sm:$0xff]
  %v11267 = vld [vmem:[%s4375 + $0xf8] sm:$0xff]
  %v11268 = vld [vmem:[%s4375 + $0x108] sm:$0xff]
  %v11269 = vld [vmem:[%s4375 + $0x110] sm:$0xff]
  %v11270 = vld [vmem:[%s4375 + $0x120] sm:$0xff]
  %v11271 = vld [vmem:[%s4375 + $0x128] sm:$0xff]
  %v11272 = vld [vmem:[%s4375 + $0x138] sm:$0xff]
  %v11273 = vld [vmem:[%s4375 + $0x140] sm:$0xff]
  %v11274 = vld [vmem:[%s4375 + $0x150] sm:$0xff]
  %v11275 = vld [vmem:[%s4375 + $0x158] sm:$0xff]
  %v11276 = vld [vmem:[%s4375 + $0x168] sm:$0xff]
  %v11277 = vld [vmem:[%s4375 + $0x170] sm:$0xff]
  %v11278 = vld [vmem:[%s4375 + $0x1b0] sm:$0xff]
  %v11279 = vld [vmem:[%s4375 + $0x1b8] sm:$0xff]
  %v11280 = vld [vmem:[%s4375 + $0x1c8] sm:$0xff]
  %v11281 = vld [vmem:[%s4375 + $0x1d0] sm:$0xff]
  %v11282 = vld [vmem:[%s4375 + $0x1e0] sm:$0xff]
  %v11283 = vld [vmem:[%s4375 + $0x1e8] sm:$0xff]
  %v11284 = vld [vmem:[%s4375 + $0x1f8] sm:$0xff]
  %v11285 = vld [vmem:[%s4375 + $0x200] sm:$0xff]
  %v11286 = vld [vmem:[%s4375 + $0x210] sm:$0xff]
  %v11287 = vld [vmem:[%s4375 + $0x218] sm:$0xff]
  %v11288 = vld [vmem:[%s4375 + $0x228] sm:$0xff]
  %v11289 = vld [vmem:[%s4375 + $0x230] sm:$0xff]
  %v11290 = vld [vmem:[%s4375 + $0x240] sm:$0xff]
  %v11291 = vld [vmem:[%s4375 + $0x248] sm:$0xff]
  %v11292 = vld [vmem:[%s4375 + $0x258] sm:$0xff]
  %v11293 = vld [vmem:[%s4375 + $0x260] sm:$0xff]
  %v11294 = vld [vmem:[%s4375 + $0x270] sm:$0xff]
  %v11295 = vld [vmem:[%s4375 + $0x278] sm:$0xff]
  %v11296 = vld [vmem:[%s4375 + $0x288] sm:$0xff]
  %v11297 = vld [vmem:[%s4375 + $0x290] sm:$0xff]
  %v11298 = vld [vmem:[%s4375 + $0x2a0] sm:$0xff]
  %v11299 = vld [vmem:[%s4375 + $0x2a8] sm:$0xff]
  %v11300 = vld [vmem:[%s4375 + $0x2b8] sm:$0xff]
  %v11301 = vld [vmem:[%s4375 + $0x2c0] sm:$0xff]
  %v11302 = vld [vmem:[%s4375 + $0x2d0] sm:$0xff]
  %v11303 = vld [vmem:[%s4375 + $0x2d8] sm:$0xff]
  %v11304 = vld [vmem:[%s4375 + $0x2e8] sm:$0xff]
  %v11305 = vld [vmem:[%s4375 + $0x2f0] sm:$0xff]
  %v11306 = vld [vmem:[%s4375 + $0x300] sm:$0xff]
  %v11307 = vld [vmem:[%s4375 + $0x308] sm:$0xff]
  %v11308 = vld [vmem:[%s4375 + $0x318] sm:$0xff]
  %v11309 = vld [vmem:[%s4375 + $0x320] sm:$0xff]
  %s11310 = scalar_lea.vmem %s4, 24
  %v11311 = vld [vmem:[%s11310] sm:$0xf]
  %v11313 = vsel %vm26, %v11246, 0
  %v11316 = vsel %vm26, %v11247, 0
  %v11319 = vsel %vm26, %v11248, 0
  %v11322 = vsel %vm26, %v11249, 0
  %v11325 = vsel %vm26, %v11250, 0
  %v11328 = vsel %vm26, %v11251, 0
  %v11331 = vsel %vm26, %v11252, 0
  %v11334 = vsel %vm26, %v11253, 0
  %v11337 = vsel %vm26, %v11254, 0
  %v11340 = vsel %vm26, %v11255, 0
  %v11343 = vsel %vm26, %v11256, 0
  %v11346 = vsel %vm26, %v11257, 0
  %v11349 = vsel %vm26, %v11258, 0
  %v11352 = vsel %vm26, %v11259, 0
  %v11355 = vsel %vm26, %v11260, 0
  %v11358 = vsel %vm26, %v11261, 0
  %v11361 = vsel %vm26, %v11262, 0
  %v11364 = vsel %vm26, %v11263, 0
  %v11367 = vsel %vm26, %v11264, 0
  %v11370 = vsel %vm26, %v11265, 0
  %v11373 = vsel %vm26, %v11266, 0
  %v11376 = vsel %vm26, %v11267, 0
  %v11379 = vsel %vm26, %v11268, 0
  %v11382 = vsel %vm26, %v11269, 0
  %v11385 = vsel %vm26, %v11270, 0
  %v11388 = vsel %vm26, %v11271, 0
  %v11391 = vsel %vm26, %v11272, 0
  %v11394 = vsel %vm26, %v11273, 0
  %v11397 = vsel %vm26, %v11274, 0
  %v11400 = vsel %vm26, %v11275, 0
  %v11403 = vsel %vm26, %v11276, 0
  %v11406 = vsel %vm26, %v11277, 0
  %v11409 = vsel %vm26, %v11278, 0
  %v11412 = vsel %vm26, %v11279, 0
  %v11415 = vsel %vm26, %v11280, 0
  %v11418 = vsel %vm26, %v11281, 0
  %v11421 = vsel %vm26, %v11282, 0
  %v11424 = vsel %vm26, %v11283, 0
  %v11427 = vsel %vm26, %v11284, 0
  %v11430 = vsel %vm26, %v11285, 0
  %v11433 = vsel %vm26, %v11286, 0
  %v11436 = vsel %vm26, %v11287, 0
  %v11439 = vsel %vm26, %v11288, 0
  %v11442 = vsel %vm26, %v11289, 0
  %v11445 = vsel %vm26, %v11290, 0
  %v11448 = vsel %vm26, %v11291, 0
  %v11451 = vsel %vm26, %v11292, 0
  %v11454 = vsel %vm26, %v11293, 0
  %v11457 = vsel %vm26, %v11294, 0
  %v11460 = vsel %vm26, %v11295, 0
  %v11463 = vsel %vm26, %v11296, 0
  %v11466 = vsel %vm26, %v11297, 0
  %v11469 = vsel %vm26, %v11298, 0
  %v11472 = vsel %vm26, %v11299, 0
  %v11475 = vsel %vm26, %v11300, 0
  %v11478 = vsel %vm26, %v11301, 0
  %v11481 = vsel %vm26, %v11302, 0
  %v11484 = vsel %vm26, %v11303, 0
  %v11487 = vsel %vm26, %v11304, 0
  %v11490 = vsel %vm26, %v11305, 0
  %v11493 = vsel %vm26, %v11306, 0
  %v11496 = vsel %vm26, %v11307, 0
  %v11499 = vsel %vm26, %v11308, 0
  %v11502 = vsel %vm26, %v11309, 0
  %v11505 = vsel %vm566, %v11311, 0
  %11507 = vmatprep.subr.mxu0 0.0
  %11508 = vmatpush1.msra.mxu0 %v11505
  %11509 = vmatprep.subr.mxu0 0.0
  %11510 = vmatpush1.msra.mxu0 0.0
  %11511 = vmatprep.subr.mxu0 0.0
  %11512 = vmatpush1.msra.mxu0 0.0
  %11513 = vmatprep.subr.mxu0 0.0
  %11514 = vmatpush1.msra.mxu0 0.0
  %11515 = vmatprep.subr.mxu0 0.0
  %11516 = vmatpush1.msra.mxu0 0.0
  %11517 = vmatprep.subr.mxu0 0.0
  %11518 = vmatpush1.msra.mxu0 0.0
  %11519 = vmatprep.subr.mxu0 0.0
  %11520 = vmatpush1.msra.mxu0 0.0
  %11521 = vmatprep.subr.mxu0 0.0
  %11522 = vmatpush1.msra.mxu0 0.0
  %11523 = vmatprep.subr.mxu0 0.0
  %11524 = vmatpush1.msra.mxu0 0.0
  %11525 = vmatprep.subr.mxu0 0.0
  %11526 = vmatpush1.msra.mxu0 0.0
  %11527 = vmatprep.subr.mxu0 0.0
  %11528 = vmatpush1.msra.mxu0 0.0
  %11529 = vmatprep.subr.mxu0 0.0
  %11530 = vmatpush1.msra.mxu0 0.0
  %11531 = vmatprep.subr.mxu0 0.0
  %11532 = vmatpush1.msra.mxu0 0.0
  %11533 = vmatprep.subr.mxu0 0.0
  %11534 = vmatpush1.msra.mxu0 0.0
  %11535 = vmatprep.subr.mxu0 0.0
  %11536 = vmatpush1.msra.mxu0 0.0
  %11537 = vmatprep.subr.mxu0 0.0
  %11538 = vmatpush1.msra.mxu0 0.0
  %11539 = vmatprep.subr.mxu0 0.0
  %11540 = vmatpush1.msra.mxu0 0.0
  %11541 = vmatprep.subr.mxu0 0.0
  %11542 = vmatpush1.msra.mxu0 0.0
  %11543 = vmatprep.subr.mxu0 0.0
  %11544 = vmatpush1.msra.mxu0 0.0
  %11545 = vmatprep.subr.mxu0 0.0
  %11546 = vmatpush1.msra.mxu0 0.0
  %11547 = vmatprep.subr.mxu0 0.0
  %11548 = vmatpush1.msra.mxu0 0.0
  %11549 = vmatprep.subr.mxu0 0.0
  %11550 = vmatpush1.msra.mxu0 0.0
  %11551 = vmatprep.subr.mxu0 0.0
  %11552 = vmatpush1.msra.mxu0 0.0
  %11553 = vmatprep.subr.mxu0 0.0
  %11554 = vmatpush1.msra.mxu0 0.0
  %11555 = vmatprep.subr.mxu0 0.0
  %11556 = vmatpush1.msra.mxu0 0.0
  %11557 = vmatprep.subr.mxu0 0.0
  %11558 = vmatpush1.msra.mxu0 0.0
  %11559 = vmatprep.subr.mxu0 0.0
  %11560 = vmatpush1.msra.mxu0 0.0
  %11561 = vmatprep.subr.mxu0 0.0
  %11562 = vmatpush1.msra.mxu0 0.0
  %11563 = vmatprep.subr.mxu0 0.0
  %11564 = vmatpush1.msra.mxu0 0.0
  %11565 = vmatprep.subr.mxu0 0.0
  %11566 = vmatpush1.msra.mxu0 0.0
  %11567 = vmatprep.subr.mxu0 0.0
  %11568 = vmatpush1.msra.mxu0 0.0
  %11569 = vmatprep.subr.mxu0 0.0
  %11570 = vmatpush1.msra.mxu0 0.0
  %11571 = vmatprep.mubr.f32.mxu0 0.0
  %11572 = vmatmul.mubr.f32.gmra.mrb[0].mxu0 %v11313
  %v11573 = vpop.f32.mrb[0].mxu0
  %v11574 = vadd.f32 0.0, %v11573
  %v11575 = vpop.f32.mrb[0].mxu0
  %11576 = vmatprep.mubr.f32.mxu0 0.0
  %11577 = vmatmul.mubr.f32.gmra.mrb[0].mxu0 %v11316
  %v11578 = vpop.f32.mrb[0].mxu0
  %v11579 = vadd.f32 0.0, %v11578
  %v11580 = vpop.f32.mrb[0].mxu0
  %11581 = vmatprep.mubr.f32.mxu0 0.0
  %11582 = vmatmul.mubr.f32.gmra.mrb[0].mxu0 %v11319
  %v11583 = vpop.f32.mrb[0].mxu0
  %v11584 = vadd.f32 0.0, %v11583
  %v11585 = vpop.f32.mrb[0].mxu0
  %11586 = vmatprep.mubr.f32.mxu0 0.0
  %11587 = vmatmul.mubr.f32.gmra.mrb[0].mxu0 %v11322
  %v11588 = vpop.f32.mrb[0].mxu0
  %v11589 = vadd.f32 0.0, %v11588
  %v11590 = vpop.f32.mrb[0].mxu0
  %11591 = vmatprep.mubr.f32.mxu0 0.0
  %11592 = vmatmul.mubr.f32.gmra.mrb[0].mxu0 %v11325
  %v11593 = vpop.f32.mrb[0].mxu0
  %v11594 = vadd.f32 0.0, %v11593
  %v11595 = vpop.f32.mrb[0].mxu0
  %11596 = vmatprep.mubr.f32.mxu0 0.0
  %11597 = vmatmul.mubr.f32.gmra.mrb[0].mxu0 %v11328
  %v11598 = vpop.f32.mrb[0].mxu0
  %v11599 = vadd.f32 0.0, %v11598
  %v11600 = vpop.f32.mrb[0].mxu0
  %11601 = vmatprep.mubr.f32.mxu0 0.0
  %11602 = vmatmul.mubr.f32.gmra.mrb[0].mxu0 %v11331
  %v11603 = vpop.f32.mrb[0].mxu0
  %v11604 = vadd.f32 0.0, %v11603
  %v11605 = vpop.f32.mrb[0].mxu0
  %11606 = vmatprep.mubr.f32.mxu0 0.0
  %11607 = vmatmul.mubr.f32.gmra.mrb[0].mxu0 %v11334
  %v11608 = vpop.f32.mrb[0].mxu0
  %v11609 = vadd.f32 0.0, %v11608
  %v11610 = vpop.f32.mrb[0].mxu0
  %11611 = vmatprep.mubr.f32.mxu0 0.0
  %11612 = vmatmul.mubr.f32.gmra.mrb[0].mxu0 %v11337
  %v11613 = vpop.f32.mrb[0].mxu0
  %v11614 = vadd.f32 0.0, %v11613
  %v11615 = vpop.f32.mrb[0].mxu0
  %11616 = vmatprep.mubr.f32.mxu0 0.0
  %11617 = vmatmul.mubr.f32.gmra.mrb[0].mxu0 %v11340
  %v11618 = vpop.f32.mrb[0].mxu0
  %v11619 = vadd.f32 0.0, %v11618
  %v11620 = vpop.f32.mrb[0].mxu0
  %11621 = vmatprep.mubr.f32.mxu0 0.0
  %11622 = vmatmul.mubr.f32.gmra.mrb[0].mxu0 %v11343
  %v11623 = vpop.f32.mrb[0].mxu0
  %v11624 = vadd.f32 0.0, %v11623
  %v11625 = vpop.f32.mrb[0].mxu0
  %11626 = vmatprep.mubr.f32.mxu0 0.0
  %11627 = vmatmul.mubr.f32.gmra.mrb[0].mxu0 %v11346
  %v11628 = vpop.f32.mrb[0].mxu0
  %v11629 = vadd.f32 0.0, %v11628
  %v11630 = vpop.f32.mrb[0].mxu0
  %11631 = vmatprep.mubr.f32.mxu0 0.0
  %11632 = vmatmul.mubr.f32.gmra.mrb[0].mxu0 %v11349
  %v11633 = vpop.f32.mrb[0].mxu0
  %v11634 = vadd.f32 0.0, %v11633
  %v11635 = vpop.f32.mrb[0].mxu0
  %11636 = vmatprep.mubr.f32.mxu0 0.0
  %11637 = vmatmul.mubr.f32.gmra.mrb[0].mxu0 %v11352
  %v11638 = vpop.f32.mrb[0].mxu0
  %v11639 = vadd.f32 0.0, %v11638
  %v11640 = vpop.f32.mrb[0].mxu0
  %11641 = vmatprep.mubr.f32.mxu0 0.0
  %11642 = vmatmul.mubr.f32.gmra.mrb[0].mxu0 %v11355
  %v11643 = vpop.f32.mrb[0].mxu0
  %v11644 = vadd.f32 0.0, %v11643
  %v11645 = vpop.f32.mrb[0].mxu0
  %11646 = vmatprep.mubr.f32.mxu0 0.0
  %11647 = vmatmul.mubr.f32.gmra.mrb[0].mxu0 %v11358
  %v11648 = vpop.f32.mrb[0].mxu0
  %v11649 = vadd.f32 0.0, %v11648
  %v11650 = vpop.f32.mrb[0].mxu0
  %11651 = vmatprep.mubr.f32.mxu0 0.0
  %11652 = vmatmul.mubr.f32.gmra.mrb[0].mxu0 %v11361
  %v11653 = vpop.f32.mrb[0].mxu0
  %v11654 = vadd.f32 0.0, %v11653
  %v11655 = vpop.f32.mrb[0].mxu0
  %11656 = vmatprep.mubr.f32.mxu0 0.0
  %11657 = vmatmul.mubr.f32.gmra.mrb[0].mxu0 %v11364
  %v11658 = vpop.f32.mrb[0].mxu0
  %v11659 = vadd.f32 0.0, %v11658
  %v11660 = vpop.f32.mrb[0].mxu0
  %11661 = vmatprep.mubr.f32.mxu0 0.0
  %11662 = vmatmul.mubr.f32.gmra.mrb[0].mxu0 %v11367
  %v11663 = vpop.f32.mrb[0].mxu0
  %v11664 = vadd.f32 0.0, %v11663
  %v11665 = vpop.f32.mrb[0].mxu0
  %11666 = vmatprep.mubr.f32.mxu0 0.0
  %11667 = vmatmul.mubr.f32.gmra.mrb[0].mxu0 %v11370
  %v11668 = vpop.f32.mrb[0].mxu0
  %v11669 = vadd.f32 0.0, %v11668
  %v11670 = vpop.f32.mrb[0].mxu0
  %11671 = vmatprep.mubr.f32.mxu0 0.0
  %11672 = vmatmul.mubr.f32.gmra.mrb[0].mxu0 %v11373
  %v11673 = vpop.f32.mrb[0].mxu0
  %v11674 = vadd.f32 0.0, %v11673
  %v11675 = vpop.f32.mrb[0].mxu0
  %11676 = vmatprep.mubr.f32.mxu0 0.0
  %11677 = vmatmul.mubr.f32.gmra.mrb[0].mxu0 %v11376
  %v11678 = vpop.f32.mrb[0].mxu0
  %v11679 = vadd.f32 0.0, %v11678
  %v11680 = vpop.f32.mrb[0].mxu0
  %11681 = vmatprep.mubr.f32.mxu0 0.0
  %11682 = vmatmul.mubr.f32.gmra.mrb[0].mxu0 %v11379
  %v11683 = vpop.f32.mrb[0].mxu0
  %v11684 = vadd.f32 0.0, %v11683
  %v11685 = vpop.f32.mrb[0].mxu0
  %11686 = vmatprep.mubr.f32.mxu0 0.0
  %11687 = vmatmul.mubr.f32.gmra.mrb[0].mxu0 %v11382
  %v11688 = vpop.f32.mrb[0].mxu0
  %v11689 = vadd.f32 0.0, %v11688
  %v11690 = vpop.f32.mrb[0].mxu0
  %11691 = vmatprep.mubr.f32.mxu0 0.0
  %11692 = vmatmul.mubr.f32.gmra.mrb[0].mxu0 %v11385
  %v11693 = vpop.f32.mrb[0].mxu0
  %v11694 = vadd.f32 0.0, %v11693
  %v11695 = vpop.f32.mrb[0].mxu0
  %11696 = vmatprep.mubr.f32.mxu0 0.0
  %11697 = vmatmul.mubr.f32.gmra.mrb[0].mxu0 %v11388
  %v11698 = vpop.f32.mrb[0].mxu0
  %v11699 = vadd.f32 0.0, %v11698
  %v11700 = vpop.f32.mrb[0].mxu0
  %11701 = vmatprep.mubr.f32.mxu0 0.0
  %11702 = vmatmul.mubr.f32.gmra.mrb[0].mxu0 %v11391
  %v11703 = vpop.f32.mrb[0].mxu0
  %v11704 = vadd.f32 0.0, %v11703
  %v11705 = vpop.f32.mrb[0].mxu0
  %11706 = vmatprep.mubr.f32.mxu0 0.0
  %11707 = vmatmul.mubr.f32.gmra.mrb[0].mxu0 %v11394
  %v11708 = vpop.f32.mrb[0].mxu0
  %v11709 = vadd.f32 0.0, %v11708
  %v11710 = vpop.f32.mrb[0].mxu0
  %11711 = vmatprep.mubr.f32.mxu0 0.0
  %11712 = vmatmul.mubr.f32.gmra.mrb[0].mxu0 %v11397
  %v11713 = vpop.f32.mrb[0].mxu0
  %v11714 = vadd.f32 0.0, %v11713
  %v11715 = vpop.f32.mrb[0].mxu0
  %11716 = vmatprep.mubr.f32.mxu0 0.0
  %11717 = vmatmul.mubr.f32.gmra.mrb[0].mxu0 %v11400
  %v11718 = vpop.f32.mrb[0].mxu0
  %v11719 = vadd.f32 0.0, %v11718
  %v11720 = vpop.f32.mrb[0].mxu0
  %11721 = vmatprep.mubr.f32.mxu0 0.0
  %11722 = vmatmul.mubr.f32.gmra.mrb[0].mxu0 %v11403
  %v11723 = vpop.f32.mrb[0].mxu0
  %v11724 = vadd.f32 0.0, %v11723
  %v11725 = vpop.f32.mrb[0].mxu0
  %11726 = vmatprep.mubr.f32.mxu0 0.0
  %11727 = vmatmul.mubr.f32.gmra.mrb[0].mxu0 %v11406
  %v11728 = vpop.f32.mrb[0].mxu0
  %v11729 = vadd.f32 0.0, %v11728
  %v11730 = vpop.f32.mrb[0].mxu0
  %11731 = vmatprep.mubr.f32.mxu0 0.0
  %11732 = vmatmul.mubr.f32.gmra.mrb[0].mxu0 %v11409
  %v11733 = vpop.f32.mrb[0].mxu0
  %v11734 = vadd.f32 0.0, %v11733
  %v11735 = vpop.f32.mrb[0].mxu0
  %11736 = vmatprep.mubr.f32.mxu0 0.0
  %11737 = vmatmul.mubr.f32.gmra.mrb[0].mxu0 %v11412
  %v11738 = vpop.f32.mrb[0].mxu0
  %v11739 = vadd.f32 0.0, %v11738
  %v11740 = vpop.f32.mrb[0].mxu0
  %11741 = vmatprep.mubr.f32.mxu0 0.0
  %11742 = vmatmul.mubr.f32.gmra.mrb[0].mxu0 %v11415
  %v11743 = vpop.f32.mrb[0].mxu0
  %v11744 = vadd.f32 0.0, %v11743
  %v11745 = vpop.f32.mrb[0].mxu0
  %11746 = vmatprep.mubr.f32.mxu0 0.0
  %11747 = vmatmul.mubr.f32.gmra.mrb[0].mxu0 %v11418
  %v11748 = vpop.f32.mrb[0].mxu0
  %v11749 = vadd.f32 0.0, %v11748
  %v11750 = vpop.f32.mrb[0].mxu0
  %11751 = vmatprep.mubr.f32.mxu0 0.0
  %11752 = vmatmul.mubr.f32.gmra.mrb[0].mxu0 %v11421
  %v11753 = vpop.f32.mrb[0].mxu0
  %v11754 = vadd.f32 0.0, %v11753
  %v11755 = vpop.f32.mrb[0].mxu0
  %11756 = vmatprep.mubr.f32.mxu0 0.0
  %11757 = vmatmul.mubr.f32.gmra.mrb[0].mxu0 %v11424
  %v11758 = vpop.f32.mrb[0].mxu0
  %v11759 = vadd.f32 0.0, %v11758
  %v11760 = vpop.f32.mrb[0].mxu0
  %11761 = vmatprep.mubr.f32.mxu0 0.0
  %11762 = vmatmul.mubr.f32.gmra.mrb[0].mxu0 %v11427
  %v11763 = vpop.f32.mrb[0].mxu0
  %v11764 = vadd.f32 0.0, %v11763
  %v11765 = vpop.f32.mrb[0].mxu0
  %11766 = vmatprep.mubr.f32.mxu0 0.0
  %11767 = vmatmul.mubr.f32.gmra.mrb[0].mxu0 %v11430
  %v11768 = vpop.f32.mrb[0].mxu0
  %v11769 = vadd.f32 0.0, %v11768
  %v11770 = vpop.f32.mrb[0].mxu0
  %11771 = vmatprep.mubr.f32.mxu0 0.0
  %11772 = vmatmul.mubr.f32.gmra.mrb[0].mxu0 %v11433
  %v11773 = vpop.f32.mrb[0].mxu0
  %v11774 = vadd.f32 0.0, %v11773
  %v11775 = vpop.f32.mrb[0].mxu0
  %11776 = vmatprep.mubr.f32.mxu0 0.0
  %11777 = vmatmul.mubr.f32.gmra.mrb[0].mxu0 %v11436
  %v11778 = vpop.f32.mrb[0].mxu0
  %v11779 = vadd.f32 0.0, %v11778
  %v11780 = vpop.f32.mrb[0].mxu0
  %11781 = vmatprep.mubr.f32.mxu0 0.0
  %11782 = vmatmul.mubr.f32.gmra.mrb[0].mxu0 %v11439
  %v11783 = vpop.f32.mrb[0].mxu0
  %v11784 = vadd.f32 0.0, %v11783
  %v11785 = vpop.f32.mrb[0].mxu0
  %11786 = vmatprep.mubr.f32.mxu0 0.0
  %11787 = vmatmul.mubr.f32.gmra.mrb[0].mxu0 %v11442
  %v11788 = vpop.f32.mrb[0].mxu0
  %v11789 = vadd.f32 0.0, %v11788
  %v11790 = vpop.f32.mrb[0].mxu0
  %11791 = vmatprep.mubr.f32.mxu0 0.0
  %11792 = vmatmul.mubr.f32.gmra.mrb[0].mxu0 %v11445
  %v11793 = vpop.f32.mrb[0].mxu0
  %v11794 = vadd.f32 0.0, %v11793
  %v11795 = vpop.f32.mrb[0].mxu0
  %11796 = vmatprep.mubr.f32.mxu0 0.0
  %11797 = vmatmul.mubr.f32.gmra.mrb[0].mxu0 %v11448
  %v11798 = vpop.f32.mrb[0].mxu0
  %v11799 = vadd.f32 0.0, %v11798
  %v11800 = vpop.f32.mrb[0].mxu0
  %11801 = vmatprep.mubr.f32.mxu0 0.0
  %11802 = vmatmul.mubr.f32.gmra.mrb[0].mxu0 %v11451
  %v11803 = vpop.f32.mrb[0].mxu0
  %v11804 = vadd.f32 0.0, %v11803
  %v11805 = vpop.f32.mrb[0].mxu0
  %11806 = vmatprep.mubr.f32.mxu0 0.0
  %11807 = vmatmul.mubr.f32.gmra.mrb[0].mxu0 %v11454
  %v11808 = vpop.f32.mrb[0].mxu0
  %v11809 = vadd.f32 0.0, %v11808
  %v11810 = vpop.f32.mrb[0].mxu0
  %11811 = vmatprep.mubr.f32.mxu0 0.0
  %11812 = vmatmul.mubr.f32.gmra.mrb[0].mxu0 %v11457
  %v11813 = vpop.f32.mrb[0].mxu0
  %v11814 = vadd.f32 0.0, %v11813
  %v11815 = vpop.f32.mrb[0].mxu0
  %11816 = vmatprep.mubr.f32.mxu0 0.0
  %11817 = vmatmul.mubr.f32.gmra.mrb[0].mxu0 %v11460
  %v11818 = vpop.f32.mrb[0].mxu0
  %v11819 = vadd.f32 0.0, %v11818
  %v11820 = vpop.f32.mrb[0].mxu0
  %11821 = vmatprep.mubr.f32.mxu0 0.0
  %11822 = vmatmul.mubr.f32.gmra.mrb[0].mxu0 %v11463
  %v11823 = vpop.f32.mrb[0].mxu0
  %v11824 = vadd.f32 0.0, %v11823
  %v11825 = vpop.f32.mrb[0].mxu0
  %11826 = vmatprep.mubr.f32.mxu0 0.0
  %11827 = vmatmul.mubr.f32.gmra.mrb[0].mxu0 %v11466
  %v11828 = vpop.f32.mrb[0].mxu0
  %v11829 = vadd.f32 0.0, %v11828
  %v11830 = vpop.f32.mrb[0].mxu0
  %11831 = vmatprep.mubr.f32.mxu0 0.0
  %11832 = vmatmul.mubr.f32.gmra.mrb[0].mxu0 %v11469
  %v11833 = vpop.f32.mrb[0].mxu0
  %v11834 = vadd.f32 0.0, %v11833
  %v11835 = vpop.f32.mrb[0].mxu0
  %11836 = vmatprep.mubr.f32.mxu0 0.0
  %11837 = vmatmul.mubr.f32.gmra.mrb[0].mxu0 %v11472
  %v11838 = vpop.f32.mrb[0].mxu0
  %v11839 = vadd.f32 0.0, %v11838
  %v11840 = vpop.f32.mrb[0].mxu0
  %11841 = vmatprep.mubr.f32.mxu0 0.0
  %11842 = vmatmul.mubr.f32.gmra.mrb[0].mxu0 %v11475
  %v11843 = vpop.f32.mrb[0].mxu0
  %v11844 = vadd.f32 0.0, %v11843
  %v11845 = vpop.f32.mrb[0].mxu0
  %11846 = vmatprep.mubr.f32.mxu0 0.0
  %11847 = vmatmul.mubr.f32.gmra.mrb[0].mxu0 %v11478
  %v11848 = vpop.f32.mrb[0].mxu0
  %v11849 = vadd.f32 0.0, %v11848
  %v11850 = vpop.f32.mrb[0].mxu0
  %11851 = vmatprep.mubr.f32.mxu0 0.0
  %11852 = vmatmul.mubr.f32.gmra.mrb[0].mxu0 %v11481
  %v11853 = vpop.f32.mrb[0].mxu0
  %v11854 = vadd.f32 0.0, %v11853
  %v11855 = vpop.f32.mrb[0].mxu0
  %11856 = vmatprep.mubr.f32.mxu0 0.0
  %11857 = vmatmul.mubr.f32.gmra.mrb[0].mxu0 %v11484
  %v11858 = vpop.f32.mrb[0].mxu0
  %v11859 = vadd.f32 0.0, %v11858
  %v11860 = vpop.f32.mrb[0].mxu0
  %11861 = vmatprep.mubr.f32.mxu0 0.0
  %11862 = vmatmul.mubr.f32.gmra.mrb[0].mxu0 %v11487
  %v11863 = vpop.f32.mrb[0].mxu0
  %v11864 = vadd.f32 0.0, %v11863
  %v11865 = vpop.f32.mrb[0].mxu0
  %11866 = vmatprep.mubr.f32.mxu0 0.0
  %11867 = vmatmul.mubr.f32.gmra.mrb[0].mxu0 %v11490
  %v11868 = vpop.f32.mrb[0].mxu0
  %v11869 = vadd.f32 0.0, %v11868
  %v11870 = vpop.f32.mrb[0].mxu0
  %11871 = vmatprep.mubr.f32.mxu0 0.0
  %11872 = vmatmul.mubr.f32.gmra.mrb[0].mxu0 %v11493
  %v11873 = vpop.f32.mrb[0].mxu0
  %v11874 = vadd.f32 0.0, %v11873
  %v11875 = vpop.f32.mrb[0].mxu0
  %11876 = vmatprep.mubr.f32.mxu0 0.0
  %11877 = vmatmul.mubr.f32.gmra.mrb[0].mxu0 %v11496
  %v11878 = vpop.f32.mrb[0].mxu0
  %v11879 = vadd.f32 0.0, %v11878
  %v11880 = vpop.f32.mrb[0].mxu0
  %11881 = vmatprep.mubr.f32.mxu0 0.0
  %11882 = vmatmul.mubr.f32.gmra.mrb[0].mxu0 %v11499
  %v11883 = vpop.f32.mrb[0].mxu0
  %v11884 = vadd.f32 0.0, %v11883
  %v11885 = vpop.f32.mrb[0].mxu0
  %11886 = vmatprep.mubr.f32.mxu0 0.0
  %11887 = vmatmul.mubr.f32.gmra.mrb[0].mxu0 %v11502
  %v11888 = vpop.f32.mrb[0].mxu0
  %v11889 = vadd.f32 0.0, %v11888
  %v11890 = vpop.f32.mrb[0].mxu0
  %11891 = vdwg.mxu0
  %v11892 = vadd.f32 %v11182, %v11574
  %v11893 = vadd.f32 %v11183, %v11579
  %v11894 = vadd.f32 %v11184, %v11584
  %v11895 = vadd.f32 %v11185, %v11589
  %v11896 = vadd.f32 %v11186, %v11594
  %v11897 = vadd.f32 %v11187, %v11599
  %v11898 = vadd.f32 %v11188, %v11604
  %v11899 = vadd.f32 %v11189, %v11609
  %v11900 = vadd.f32 %v11190, %v11614
  %v11901 = vadd.f32 %v11191, %v11619
  %v11902 = vadd.f32 %v11192, %v11624
  %v11903 = vadd.f32 %v11193, %v11629
  %v11904 = vadd.f32 %v11194, %v11634
  %v11905 = vadd.f32 %v11195, %v11639
  %v11906 = vadd.f32 %v11196, %v11644
  %v11907 = vadd.f32 %v11197, %v11649
  %v11908 = vadd.f32 %v11198, %v11654
  %v11909 = vadd.f32 %v11199, %v11659
  %v11910 = vadd.f32 %v11200, %v11664
  %v11911 = vadd.f32 %v11201, %v11669
  %v11912 = vadd.f32 %v11202, %v11674
  %v11913 = vadd.f32 %v11203, %v11679
  %v11914 = vadd.f32 %v11204, %v11684
  %v11915 = vadd.f32 %v11205, %v11689
  %v11916 = vadd.f32 %v11206, %v11694
  %v11917 = vadd.f32 %v11207, %v11699
  %v11918 = vadd.f32 %v11208, %v11704
  %v11919 = vadd.f32 %v11209, %v11709
  %v11920 = vadd.f32 %v11210, %v11714
  %v11921 = vadd.f32 %v11211, %v11719
  %v11922 = vadd.f32 %v11212, %v11724
  %v11923 = vadd.f32 %v11213, %v11729
  %v11924 = vadd.f32 %v11214, %v11734
  %v11925 = vadd.f32 %v11215, %v11739
  %v11926 = vadd.f32 %v11216, %v11744
  %v11927 = vadd.f32 %v11217, %v11749
  %v11928 = vadd.f32 %v11218, %v11754
  %v11929 = vadd.f32 %v11219, %v11759
  %v11930 = vadd.f32 %v11220, %v11764
  %v11931 = vadd.f32 %v11221, %v11769
  %v11932 = vadd.f32 %v11222, %v11774
  %v11933 = vadd.f32 %v11223, %v11779
  %v11934 = vadd.f32 %v11224, %v11784
  %v11935 = vadd.f32 %v11225, %v11789
  %v11936 = vadd.f32 %v11226, %v11794
  %v11937 = vadd.f32 %v11227, %v11799
  %v11938 = vadd.f32 %v11228, %v11804
  %v11939 = vadd.f32 %v11229, %v11809
  %v11940 = vadd.f32 %v11230, %v11814
  %v11941 = vadd.f32 %v11231, %v11819
  %v11942 = vadd.f32 %v11232, %v11824
  %v11943 = vadd.f32 %v11233, %v11829
  %v11944 = vadd.f32 %v11234, %v11834
  %v11945 = vadd.f32 %v11235, %v11839
  %v11946 = vadd.f32 %v11236, %v11844
  %v11947 = vadd.f32 %v11237, %v11849
  %v11948 = vadd.f32 %v11238, %v11854
  %v11949 = vadd.f32 %v11239, %v11859
  %v11950 = vadd.f32 %v11240, %v11864
  %v11951 = vadd.f32 %v11241, %v11869
  %v11952 = vadd.f32 %v11242, %v11874
  %v11953 = vadd.f32 %v11243, %v11879
  %v11954 = vadd.f32 %v11244, %v11884
  %v11955 = vadd.f32 %v11245, %v11889
  %v11956 = vld [vmem:[%s4375 + $0x1] sm:$0xff]
  %v11957 = vld [vmem:[%s4375 + $0x9] sm:$0xff]
  %v11958 = vld [vmem:[%s4375 + $0x19] sm:$0xff]
  %v11959 = vld [vmem:[%s4375 + $0x21] sm:$0xff]
  %v11960 = vld [vmem:[%s4375 + $0x31] sm:$0xff]
  %v11961 = vld [vmem:[%s4375 + $0x39] sm:$0xff]
  %v11962 = vld [vmem:[%s4375 + $0x49] sm:$0xff]
  %v11963 = vld [vmem:[%s4375 + $0x51] sm:$0xff]
  %v11964 = vld [vmem:[%s4375 + $0x61] sm:$0xff]
  %v11965 = vld [vmem:[%s4375 + $0x69] sm:$0xff]
  %v11966 = vld [vmem:[%s4375 + $0x79] sm:$0xff]
  %v11967 = vld [vmem:[%s4375 + $0x81] sm:$0xff]
  %v11968 = vld [vmem:[%s4375 + $0x91] sm:$0xff]
  %v11969 = vld [vmem:[%s4375 + $0x99] sm:$0xff]
  %v11970 = vld [vmem:[%s4375 + $0xa9] sm:$0xff]
  %v11971 = vld [vmem:[%s4375 + $0xb1] sm:$0xff]
  %v11972 = vld [vmem:[%s4375 + $0xc1] sm:$0xff]
  %v11973 = vld [vmem:[%s4375 + $0xc9] sm:$0xff]
  %v11974 = vld [vmem:[%s4375 + $0xd9] sm:$0xff]
  %v11975 = vld [vmem:[%s4375 + $0xe1] sm:$0xff]
  %v11976 = vld [vmem:[%s4375 + $0xf1] sm:$0xff]
  %v11977 = vld [vmem:[%s4375 + $0xf9] sm:$0xff]
  %v11978 = vld [vmem:[%s4375 + $0x109] sm:$0xff]
  %v11979 = vld [vmem:[%s4375 + $0x111] sm:$0xff]
  %v11980 = vld [vmem:[%s4375 + $0x121] sm:$0xff]
  %v11981 = vld [vmem:[%s4375 + $0x129] sm:$0xff]
  %v11982 = vld [vmem:[%s4375 + $0x139] sm:$0xff]
  %v11983 = vld [vmem:[%s4375 + $0x141] sm:$0xff]
  %v11984 = vld [vmem:[%s4375 + $0x151] sm:$0xff]
  %v11985 = vld [vmem:[%s4375 + $0x159] sm:$0xff]
  %v11986 = vld [vmem:[%s4375 + $0x169] sm:$0xff]
  %v11987 = vld [vmem:[%s4375 + $0x171] sm:$0xff]
  %v11988 = vld [vmem:[%s4375 + $0x1b1] sm:$0xff]
  %v11989 = vld [vmem:[%s4375 + $0x1b9] sm:$0xff]
  %v11990 = vld [vmem:[%s4375 + $0x1c9] sm:$0xff]
  %v11991 = vld [vmem:[%s4375 + $0x1d1] sm:$0xff]
  %v11992 = vld [vmem:[%s4375 + $0x1e1] sm:$0xff]
  %v11993 = vld [vmem:[%s4375 + $0x1e9] sm:$0xff]
  %v11994 = vld [vmem:[%s4375 + $0x1f9] sm:$0xff]
  %v11995 = vld [vmem:[%s4375 + $0x201] sm:$0xff]
  %v11996 = vld [vmem:[%s4375 + $0x211] sm:$0xff]
  %v11997 = vld [vmem:[%s4375 + $0x219] sm:$0xff]
  %v11998 = vld [vmem:[%s4375 + $0x229] sm:$0xff]
  %v11999 = vld [vmem:[%s4375 + $0x231] sm:$0xff]
  %v12000 = vld [vmem:[%s4375 + $0x241] sm:$0xff]
  %v12001 = vld [vmem:[%s4375 + $0x249] sm:$0xff]
  %v12002 = vld [vmem:[%s4375 + $0x259] sm:$0xff]
  %v12003 = vld [vmem:[%s4375 + $0x261] sm:$0xff]
  %v12004 = vld [vmem:[%s4375 + $0x271] sm:$0xff]
  %v12005 = vld [vmem:[%s4375 + $0x279] sm:$0xff]
  %v12006 = vld [vmem:[%s4375 + $0x289] sm:$0xff]
  %v12007 = vld [vmem:[%s4375 + $0x291] sm:$0xff]
  %v12008 = vld [vmem:[%s4375 + $0x2a1] sm:$0xff]
  %v12009 = vld [vmem:[%s4375 + $0x2a9] sm:$0xff]
  %v12010 = vld [vmem:[%s4375 + $0x2b9] sm:$0xff]
  %v12011 = vld [vmem:[%s4375 + $0x2c1] sm:$0xff]
  %v12012 = vld [vmem:[%s4375 + $0x2d1] sm:$0xff]
  %v12013 = vld [vmem:[%s4375 + $0x2d9] sm:$0xff]
  %v12014 = vld [vmem:[%s4375 + $0x2e9] sm:$0xff]
  %v12015 = vld [vmem:[%s4375 + $0x2f1] sm:$0xff]
  %v12016 = vld [vmem:[%s4375 + $0x301] sm:$0xff]
  %v12017 = vld [vmem:[%s4375 + $0x309] sm:$0xff]
  %v12018 = vld [vmem:[%s4375 + $0x319] sm:$0xff]
  %v12019 = vld [vmem:[%s4375 + $0x321] sm:$0xff]
  %s12020 = scalar_lea.vmem %s4, 28
  %v12021 = vld [vmem:[%s12020] sm:$0xf]
  %v12023 = vsel %vm26, %v11956, 0
  %v12026 = vsel %vm26, %v11957, 0
  %v12029 = vsel %vm26, %v11958, 0
  %v12032 = vsel %vm26, %v11959, 0
  %v12035 = vsel %vm26, %v11960, 0
  %v12038 = vsel %vm26, %v11961, 0
  %v12041 = vsel %vm26, %v11962, 0
  %v12044 = vsel %vm26, %v11963, 0
  %v12047 = vsel %vm26, %v11964, 0
  %v12050 = vsel %vm26, %v11965, 0
  %v12053 = vsel %vm26, %v11966, 0
  %v12056 = vsel %vm26, %v11967, 0
  %v12059 = vsel %vm26, %v11968, 0
  %v12062 = vsel %vm26, %v11969, 0
  %v12065 = vsel %vm26, %v11970, 0
  %v12068 = vsel %vm26, %v11971, 0
  %v12071 = vsel %vm26, %v11972, 0
  %v12074 = vsel %vm26, %v11973, 0
  %v12077 = vsel %vm26, %v11974, 0
  %v12080 = vsel %vm26, %v11975, 0
  %v12083 = vsel %vm26, %v11976, 0
  %v12086 = vsel %vm26, %v11977, 0
  %v12089 = vsel %vm26, %v11978, 0
  %v12092 = vsel %vm26, %v11979, 0
  %v12095 = vsel %vm26, %v11980, 0
  %v12098 = vsel %vm26, %v11981, 0
  %v12101 = vsel %vm26, %v11982, 0
  %v12104 = vsel %vm26, %v11983, 0
  %v12107 = vsel %vm26, %v11984, 0
  %v12110 = vsel %vm26, %v11985, 0
  %v12113 = vsel %vm26, %v11986, 0
  %v12116 = vsel %vm26, %v11987, 0
  %v12119 = vsel %vm26, %v11988, 0
  %v12122 = vsel %vm26, %v11989, 0
  %v12125 = vsel %vm26, %v11990, 0
  %v12128 = vsel %vm26, %v11991, 0
  %v12131 = vsel %vm26, %v11992, 0
  %v12134 = vsel %vm26, %v11993, 0
  %v12137 = vsel %vm26, %v11994, 0
  %v12140 = vsel %vm26, %v11995, 0
  %v12143 = vsel %vm26, %v11996, 0
  %v12146 = vsel %vm26, %v11997, 0
  %v12149 = vsel %vm26, %v11998, 0
  %v12152 = vsel %vm26, %v11999, 0
  %v12155 = vsel %vm26, %v12000, 0
  %v12158 = vsel %vm26, %v12001, 0
  %v12161 = vsel %vm26, %v12002, 0
  %v12164 = vsel %vm26, %v12003, 0
  %v12167 = vsel %vm26, %v12004, 0
  %v12170 = vsel %vm26, %v12005, 0
  %v12173 = vsel %vm26, %v12006, 0
  %v12176 = vsel %vm26, %v12007, 0
  %v12179 = vsel %vm26, %v12008, 0
  %v12182 = vsel %vm26, %v12009, 0
  %v12185 = vsel %vm26, %v12010, 0
  %v12188 = vsel %vm26, %v12011, 0
  %v12191 = vsel %vm26, %v12012, 0
  %v12194 = vsel %vm26, %v12013, 0
  %v12197 = vsel %vm26, %v12014, 0
  %v12200 = vsel %vm26, %v12015, 0
  %v12203 = vsel %vm26, %v12016, 0
  %v12206 = vsel %vm26, %v12017, 0
  %v12209 = vsel %vm26, %v12018, 0
  %v12212 = vsel %vm26, %v12019, 0
  %v12215 = vsel %vm566, %v12021, 0
  %12217 = vmatprep.subr.mxu0 0.0
  %12218 = vmatpush1.msra.mxu0 %v12215
  %12219 = vmatprep.subr.mxu0 0.0
  %12220 = vmatpush1.msra.mxu0 0.0
  %12221 = vmatprep.subr.mxu0 0.0
  %12222 = vmatpush1.msra.mxu0 0.0
  %12223 = vmatprep.subr.mxu0 0.0
  %12224 = vmatpush1.msra.mxu0 0.0
  %12225 = vmatprep.subr.mxu0 0.0
  %12226 = vmatpush1.msra.mxu0 0.0
  %12227 = vmatprep.subr.mxu0 0.0
  %12228 = vmatpush1.msra.mxu0 0.0
  %12229 = vmatprep.subr.mxu0 0.0
  %12230 = vmatpush1.msra.mxu0 0.0
  %12231 = vmatprep.subr.mxu0 0.0
  %12232 = vmatpush1.msra.mxu0 0.0
  %12233 = vmatprep.subr.mxu0 0.0
  %12234 = vmatpush1.msra.mxu0 0.0
  %12235 = vmatprep.subr.mxu0 0.0
  %12236 = vmatpush1.msra.mxu0 0.0
  %12237 = vmatprep.subr.mxu0 0.0
  %12238 = vmatpush1.msra.mxu0 0.0
  %12239 = vmatprep.subr.mxu0 0.0
  %12240 = vmatpush1.msra.mxu0 0.0
  %12241 = vmatprep.subr.mxu0 0.0
  %12242 = vmatpush1.msra.mxu0 0.0
  %12243 = vmatprep.subr.mxu0 0.0
  %12244 = vmatpush1.msra.mxu0 0.0
  %12245 = vmatprep.subr.mxu0 0.0
  %12246 = vmatpush1.msra.mxu0 0.0
  %12247 = vmatprep.subr.mxu0 0.0
  %12248 = vmatpush1.msra.mxu0 0.0
  %12249 = vmatprep.subr.mxu0 0.0
  %12250 = vmatpush1.msra.mxu0 0.0
  %12251 = vmatprep.subr.mxu0 0.0
  %12252 = vmatpush1.msra.mxu0 0.0
  %12253 = vmatprep.subr.mxu0 0.0
  %12254 = vmatpush1.msra.mxu0 0.0
  %12255 = vmatprep.subr.mxu0 0.0
  %12256 = vmatpush1.msra.mxu0 0.0
  %12257 = vmatprep.subr.mxu0 0.0
  %12258 = vmatpush1.msra.mxu0 0.0
  %12259 = vmatprep.subr.mxu0 0.0
  %12260 = vmatpush1.msra.mxu0 0.0
  %12261 = vmatprep.subr.mxu0 0.0
  %12262 = vmatpush1.msra.mxu0 0.0
  %12263 = vmatprep.subr.mxu0 0.0
  %12264 = vmatpush1.msra.mxu0 0.0
  %12265 = vmatprep.subr.mxu0 0.0
  %12266 = vmatpush1.msra.mxu0 0.0
  %12267 = vmatprep.subr.mxu0 0.0
  %12268 = vmatpush1.msra.mxu0 0.0
  %12269 = vmatprep.subr.mxu0 0.0
  %12270 = vmatpush1.msra.mxu0 0.0
  %12271 = vmatprep.subr.mxu0 0.0
  %12272 = vmatpush1.msra.mxu0 0.0
  %12273 = vmatprep.subr.mxu0 0.0
  %12274 = vmatpush1.msra.mxu0 0.0
  %12275 = vmatprep.subr.mxu0 0.0
  %12276 = vmatpush1.msra.mxu0 0.0
  %12277 = vmatprep.subr.mxu0 0.0
  %12278 = vmatpush1.msra.mxu0 0.0
  %12279 = vmatprep.subr.mxu0 0.0
  %12280 = vmatpush1.msra.mxu0 0.0
  %12281 = vmatprep.mubr.f32.mxu0 0.0
  %12282 = vmatmul.mubr.f32.gmra.mrb[0].mxu0 %v12023
  %v12283 = vpop.f32.mrb[0].mxu0
  %v12284 = vadd.f32 0.0, %v12283
  %v12285 = vpop.f32.mrb[0].mxu0
  %12286 = vmatprep.mubr.f32.mxu0 0.0
  %12287 = vmatmul.mubr.f32.gmra.mrb[0].mxu0 %v12026
  %v12288 = vpop.f32.mrb[0].mxu0
  %v12289 = vadd.f32 0.0, %v12288
  %v12290 = vpop.f32.mrb[0].mxu0
  %12291 = vmatprep.mubr.f32.mxu0 0.0
  %12292 = vmatmul.mubr.f32.gmra.mrb[0].mxu0 %v12029
  %v12293 = vpop.f32.mrb[0].mxu0
  %v12294 = vadd.f32 0.0, %v12293
  %v12295 = vpop.f32.mrb[0].mxu0
  %12296 = vmatprep.mubr.f32.mxu0 0.0
  %12297 = vmatmul.mubr.f32.gmra.mrb[0].mxu0 %v12032
  %v12298 = vpop.f32.mrb[0].mxu0
  %v12299 = vadd.f32 0.0, %v12298
  %v12300 = vpop.f32.mrb[0].mxu0
  %12301 = vmatprep.mubr.f32.mxu0 0.0
  %12302 = vmatmul.mubr.f32.gmra.mrb[0].mxu0 %v12035
  %v12303 = vpop.f32.mrb[0].mxu0
  %v12304 = vadd.f32 0.0, %v12303
  %v12305 = vpop.f32.mrb[0].mxu0
  %12306 = vmatprep.mubr.f32.mxu0 0.0
  %12307 = vmatmul.mubr.f32.gmra.mrb[0].mxu0 %v12038
  %v12308 = vpop.f32.mrb[0].mxu0
  %v12309 = vadd.f32 0.0, %v12308
  %v12310 = vpop.f32.mrb[0].mxu0
  %12311 = vmatprep.mubr.f32.mxu0 0.0
  %12312 = vmatmul.mubr.f32.gmra.mrb[0].mxu0 %v12041
  %v12313 = vpop.f32.mrb[0].mxu0
  %v12314 = vadd.f32 0.0, %v12313
  %v12315 = vpop.f32.mrb[0].mxu0
  %12316 = vmatprep.mubr.f32.mxu0 0.0
  %12317 = vmatmul.mubr.f32.gmra.mrb[0].mxu0 %v12044
  %v12318 = vpop.f32.mrb[0].mxu0
  %v12319 = vadd.f32 0.0, %v12318
  %v12320 = vpop.f32.mrb[0].mxu0
  %12321 = vmatprep.mubr.f32.mxu0 0.0
  %12322 = vmatmul.mubr.f32.gmra.mrb[0].mxu0 %v12047
  %v12323 = vpop.f32.mrb[0].mxu0
  %v12324 = vadd.f32 0.0, %v12323
  %v12325 = vpop.f32.mrb[0].mxu0
  %12326 = vmatprep.mubr.f32.mxu0 0.0
  %12327 = vmatmul.mubr.f32.gmra.mrb[0].mxu0 %v12050
  %v12328 = vpop.f32.mrb[0].mxu0
  %v12329 = vadd.f32 0.0, %v12328
  %v12330 = vpop.f32.mrb[0].mxu0
  %12331 = vmatprep.mubr.f32.mxu0 0.0
  %12332 = vmatmul.mubr.f32.gmra.mrb[0].mxu0 %v12053
  %v12333 = vpop.f32.mrb[0].mxu0
  %v12334 = vadd.f32 0.0, %v12333
  %v12335 = vpop.f32.mrb[0].mxu0
  %12336 = vmatprep.mubr.f32.mxu0 0.0
  %12337 = vmatmul.mubr.f32.gmra.mrb[0].mxu0 %v12056
  %v12338 = vpop.f32.mrb[0].mxu0
  %v12339 = vadd.f32 0.0, %v12338
  %v12340 = vpop.f32.mrb[0].mxu0
  %12341 = vmatprep.mubr.f32.mxu0 0.0
  %12342 = vmatmul.mubr.f32.gmra.mrb[0].mxu0 %v12059
  %v12343 = vpop.f32.mrb[0].mxu0
  %v12344 = vadd.f32 0.0, %v12343
  %v12345 = vpop.f32.mrb[0].mxu0
  %12346 = vmatprep.mubr.f32.mxu0 0.0
  %12347 = vmatmul.mubr.f32.gmra.mrb[0].mxu0 %v12062
  %v12348 = vpop.f32.mrb[0].mxu0
  %v12349 = vadd.f32 0.0, %v12348
  %v12350 = vpop.f32.mrb[0].mxu0
  %12351 = vmatprep.mubr.f32.mxu0 0.0
  %12352 = vmatmul.mubr.f32.gmra.mrb[0].mxu0 %v12065
  %v12353 = vpop.f32.mrb[0].mxu0
  %v12354 = vadd.f32 0.0, %v12353
  %v12355 = vpop.f32.mrb[0].mxu0
  %12356 = vmatprep.mubr.f32.mxu0 0.0
  %12357 = vmatmul.mubr.f32.gmra.mrb[0].mxu0 %v12068
  %v12358 = vpop.f32.mrb[0].mxu0
  %v12359 = vadd.f32 0.0, %v12358
  %v12360 = vpop.f32.mrb[0].mxu0
  %12361 = vmatprep.mubr.f32.mxu0 0.0
  %12362 = vmatmul.mubr.f32.gmra.mrb[0].mxu0 %v12071
  %v12363 = vpop.f32.mrb[0].mxu0
  %v12364 = vadd.f32 0.0, %v12363
  %v12365 = vpop.f32.mrb[0].mxu0
  %12366 = vmatprep.mubr.f32.mxu0 0.0
  %12367 = vmatmul.mubr.f32.gmra.mrb[0].mxu0 %v12074
  %v12368 = vpop.f32.mrb[0].mxu0
  %v12369 = vadd.f32 0.0, %v12368
  %v12370 = vpop.f32.mrb[0].mxu0
  %12371 = vmatprep.mubr.f32.mxu0 0.0
  %12372 = vmatmul.mubr.f32.gmra.mrb[0].mxu0 %v12077
  %v12373 = vpop.f32.mrb[0].mxu0
  %v12374 = vadd.f32 0.0, %v12373
  %v12375 = vpop.f32.mrb[0].mxu0
  %12376 = vmatprep.mubr.f32.mxu0 0.0
  %12377 = vmatmul.mubr.f32.gmra.mrb[0].mxu0 %v12080
  %v12378 = vpop.f32.mrb[0].mxu0
  %v12379 = vadd.f32 0.0, %v12378
  %v12380 = vpop.f32.mrb[0].mxu0
  %12381 = vmatprep.mubr.f32.mxu0 0.0
  %12382 = vmatmul.mubr.f32.gmra.mrb[0].mxu0 %v12083
  %v12383 = vpop.f32.mrb[0].mxu0
  %v12384 = vadd.f32 0.0, %v12383
  %v12385 = vpop.f32.mrb[0].mxu0
  %12386 = vmatprep.mubr.f32.mxu0 0.0
  %12387 = vmatmul.mubr.f32.gmra.mrb[0].mxu0 %v12086
  %v12388 = vpop.f32.mrb[0].mxu0
  %v12389 = vadd.f32 0.0, %v12388
  %v12390 = vpop.f32.mrb[0].mxu0
  %12391 = vmatprep.mubr.f32.mxu0 0.0
  %12392 = vmatmul.mubr.f32.gmra.mrb[0].mxu0 %v12089
  %v12393 = vpop.f32.mrb[0].mxu0
  %v12394 = vadd.f32 0.0, %v12393
  %v12395 = vpop.f32.mrb[0].mxu0
  %12396 = vmatprep.mubr.f32.mxu0 0.0
  %12397 = vmatmul.mubr.f32.gmra.mrb[0].mxu0 %v12092
  %v12398 = vpop.f32.mrb[0].mxu0
  %v12399 = vadd.f32 0.0, %v12398
  %v12400 = vpop.f32.mrb[0].mxu0
  %12401 = vmatprep.mubr.f32.mxu0 0.0
  %12402 = vmatmul.mubr.f32.gmra.mrb[0].mxu0 %v12095
  %v12403 = vpop.f32.mrb[0].mxu0
  %v12404 = vadd.f32 0.0, %v12403
  %v12405 = vpop.f32.mrb[0].mxu0
  %12406 = vmatprep.mubr.f32.mxu0 0.0
  %12407 = vmatmul.mubr.f32.gmra.mrb[0].mxu0 %v12098
  %v12408 = vpop.f32.mrb[0].mxu0
  %v12409 = vadd.f32 0.0, %v12408
  %v12410 = vpop.f32.mrb[0].mxu0
  %12411 = vmatprep.mubr.f32.mxu0 0.0
  %12412 = vmatmul.mubr.f32.gmra.mrb[0].mxu0 %v12101
  %v12413 = vpop.f32.mrb[0].mxu0
  %v12414 = vadd.f32 0.0, %v12413
  %v12415 = vpop.f32.mrb[0].mxu0
  %12416 = vmatprep.mubr.f32.mxu0 0.0
  %12417 = vmatmul.mubr.f32.gmra.mrb[0].mxu0 %v12104
  %v12418 = vpop.f32.mrb[0].mxu0
  %v12419 = vadd.f32 0.0, %v12418
  %v12420 = vpop.f32.mrb[0].mxu0
  %12421 = vmatprep.mubr.f32.mxu0 0.0
  %12422 = vmatmul.mubr.f32.gmra.mrb[0].mxu0 %v12107
  %v12423 = vpop.f32.mrb[0].mxu0
  %v12424 = vadd.f32 0.0, %v12423
  %v12425 = vpop.f32.mrb[0].mxu0
  %12426 = vmatprep.mubr.f32.mxu0 0.0
  %12427 = vmatmul.mubr.f32.gmra.mrb[0].mxu0 %v12110
  %v12428 = vpop.f32.mrb[0].mxu0
  %v12429 = vadd.f32 0.0, %v12428
  %v12430 = vpop.f32.mrb[0].mxu0
  %12431 = vmatprep.mubr.f32.mxu0 0.0
  %12432 = vmatmul.mubr.f32.gmra.mrb[0].mxu0 %v12113
  %v12433 = vpop.f32.mrb[0].mxu0
  %v12434 = vadd.f32 0.0, %v12433
  %v12435 = vpop.f32.mrb[0].mxu0
  %12436 = vmatprep.mubr.f32.mxu0 0.0
  %12437 = vmatmul.mubr.f32.gmra.mrb[0].mxu0 %v12116
  %v12438 = vpop.f32.mrb[0].mxu0
  %v12439 = vadd.f32 0.0, %v12438
  %v12440 = vpop.f32.mrb[0].mxu0
  %12441 = vmatprep.mubr.f32.mxu0 0.0
  %12442 = vmatmul.mubr.f32.gmra.mrb[0].mxu0 %v12119
  %v12443 = vpop.f32.mrb[0].mxu0
  %v12444 = vadd.f32 0.0, %v12443
  %v12445 = vpop.f32.mrb[0].mxu0
  %12446 = vmatprep.mubr.f32.mxu0 0.0
  %12447 = vmatmul.mubr.f32.gmra.mrb[0].mxu0 %v12122
  %v12448 = vpop.f32.mrb[0].mxu0
  %v12449 = vadd.f32 0.0, %v12448
  %v12450 = vpop.f32.mrb[0].mxu0
  %12451 = vmatprep.mubr.f32.mxu0 0.0
  %12452 = vmatmul.mubr.f32.gmra.mrb[0].mxu0 %v12125
  %v12453 = vpop.f32.mrb[0].mxu0
  %v12454 = vadd.f32 0.0, %v12453
  %v12455 = vpop.f32.mrb[0].mxu0
  %12456 = vmatprep.mubr.f32.mxu0 0.0
  %12457 = vmatmul.mubr.f32.gmra.mrb[0].mxu0 %v12128
  %v12458 = vpop.f32.mrb[0].mxu0
  %v12459 = vadd.f32 0.0, %v12458
  %v12460 = vpop.f32.mrb[0].mxu0
  %12461 = vmatprep.mubr.f32.mxu0 0.0
  %12462 = vmatmul.mubr.f32.gmra.mrb[0].mxu0 %v12131
  %v12463 = vpop.f32.mrb[0].mxu0
  %v12464 = vadd.f32 0.0, %v12463
  %v12465 = vpop.f32.mrb[0].mxu0
  %12466 = vmatprep.mubr.f32.mxu0 0.0
  %12467 = vmatmul.mubr.f32.gmra.mrb[0].mxu0 %v12134
  %v12468 = vpop.f32.mrb[0].mxu0
  %v12469 = vadd.f32 0.0, %v12468
  %v12470 = vpop.f32.mrb[0].mxu0
  %12471 = vmatprep.mubr.f32.mxu0 0.0
  %12472 = vmatmul.mubr.f32.gmra.mrb[0].mxu0 %v12137
  %v12473 = vpop.f32.mrb[0].mxu0
  %v12474 = vadd.f32 0.0, %v12473
  %v12475 = vpop.f32.mrb[0].mxu0
  %12476 = vmatprep.mubr.f32.mxu0 0.0
  %12477 = vmatmul.mubr.f32.gmra.mrb[0].mxu0 %v12140
  %v12478 = vpop.f32.mrb[0].mxu0
  %v12479 = vadd.f32 0.0, %v12478
  %v12480 = vpop.f32.mrb[0].mxu0
  %12481 = vmatprep.mubr.f32.mxu0 0.0
  %12482 = vmatmul.mubr.f32.gmra.mrb[0].mxu0 %v12143
  %v12483 = vpop.f32.mrb[0].mxu0
  %v12484 = vadd.f32 0.0, %v12483
  %v12485 = vpop.f32.mrb[0].mxu0
  %12486 = vmatprep.mubr.f32.mxu0 0.0
  %12487 = vmatmul.mubr.f32.gmra.mrb[0].mxu0 %v12146
  %v12488 = vpop.f32.mrb[0].mxu0
  %v12489 = vadd.f32 0.0, %v12488
  %v12490 = vpop.f32.mrb[0].mxu0
  %12491 = vmatprep.mubr.f32.mxu0 0.0
  %12492 = vmatmul.mubr.f32.gmra.mrb[0].mxu0 %v12149
  %v12493 = vpop.f32.mrb[0].mxu0
  %v12494 = vadd.f32 0.0, %v12493
  %v12495 = vpop.f32.mrb[0].mxu0
  %12496 = vmatprep.mubr.f32.mxu0 0.0
  %12497 = vmatmul.mubr.f32.gmra.mrb[0].mxu0 %v12152
  %v12498 = vpop.f32.mrb[0].mxu0
  %v12499 = vadd.f32 0.0, %v12498
  %v12500 = vpop.f32.mrb[0].mxu0
  %12501 = vmatprep.mubr.f32.mxu0 0.0
  %12502 = vmatmul.mubr.f32.gmra.mrb[0].mxu0 %v12155
  %v12503 = vpop.f32.mrb[0].mxu0
  %v12504 = vadd.f32 0.0, %v12503
  %v12505 = vpop.f32.mrb[0].mxu0
  %12506 = vmatprep.mubr.f32.mxu0 0.0
  %12507 = vmatmul.mubr.f32.gmra.mrb[0].mxu0 %v12158
  %v12508 = vpop.f32.mrb[0].mxu0
  %v12509 = vadd.f32 0.0, %v12508
  %v12510 = vpop.f32.mrb[0].mxu0
  %12511 = vmatprep.mubr.f32.mxu0 0.0
  %12512 = vmatmul.mubr.f32.gmra.mrb[0].mxu0 %v12161
  %v12513 = vpop.f32.mrb[0].mxu0
  %v12514 = vadd.f32 0.0, %v12513
  %v12515 = vpop.f32.mrb[0].mxu0
  %12516 = vmatprep.mubr.f32.mxu0 0.0
  %12517 = vmatmul.mubr.f32.gmra.mrb[0].mxu0 %v12164
  %v12518 = vpop.f32.mrb[0].mxu0
  %v12519 = vadd.f32 0.0, %v12518
  %v12520 = vpop.f32.mrb[0].mxu0
  %12521 = vmatprep.mubr.f32.mxu0 0.0
  %12522 = vmatmul.mubr.f32.gmra.mrb[0].mxu0 %v12167
  %v12523 = vpop.f32.mrb[0].mxu0
  %v12524 = vadd.f32 0.0, %v12523
  %v12525 = vpop.f32.mrb[0].mxu0
  %12526 = vmatprep.mubr.f32.mxu0 0.0
  %12527 = vmatmul.mubr.f32.gmra.mrb[0].mxu0 %v12170
  %v12528 = vpop.f32.mrb[0].mxu0
  %v12529 = vadd.f32 0.0, %v12528
  %v12530 = vpop.f32.mrb[0].mxu0
  %12531 = vmatprep.mubr.f32.mxu0 0.0
  %12532 = vmatmul.mubr.f32.gmra.mrb[0].mxu0 %v12173
  %v12533 = vpop.f32.mrb[0].mxu0
  %v12534 = vadd.f32 0.0, %v12533
  %v12535 = vpop.f32.mrb[0].mxu0
  %12536 = vmatprep.mubr.f32.mxu0 0.0
  %12537 = vmatmul.mubr.f32.gmra.mrb[0].mxu0 %v12176
  %v12538 = vpop.f32.mrb[0].mxu0
  %v12539 = vadd.f32 0.0, %v12538
  %v12540 = vpop.f32.mrb[0].mxu0
  %12541 = vmatprep.mubr.f32.mxu0 0.0
  %12542 = vmatmul.mubr.f32.gmra.mrb[0].mxu0 %v12179
  %v12543 = vpop.f32.mrb[0].mxu0
  %v12544 = vadd.f32 0.0, %v12543
  %v12545 = vpop.f32.mrb[0].mxu0
  %12546 = vmatprep.mubr.f32.mxu0 0.0
  %12547 = vmatmul.mubr.f32.gmra.mrb[0].mxu0 %v12182
  %v12548 = vpop.f32.mrb[0].mxu0
  %v12549 = vadd.f32 0.0, %v12548
  %v12550 = vpop.f32.mrb[0].mxu0
  %12551 = vmatprep.mubr.f32.mxu0 0.0
  %12552 = vmatmul.mubr.f32.gmra.mrb[0].mxu0 %v12185
  %v12553 = vpop.f32.mrb[0].mxu0
  %v12554 = vadd.f32 0.0, %v12553
  %v12555 = vpop.f32.mrb[0].mxu0
  %12556 = vmatprep.mubr.f32.mxu0 0.0
  %12557 = vmatmul.mubr.f32.gmra.mrb[0].mxu0 %v12188
  %v12558 = vpop.f32.mrb[0].mxu0
  %v12559 = vadd.f32 0.0, %v12558
  %v12560 = vpop.f32.mrb[0].mxu0
  %12561 = vmatprep.mubr.f32.mxu0 0.0
  %12562 = vmatmul.mubr.f32.gmra.mrb[0].mxu0 %v12191
  %v12563 = vpop.f32.mrb[0].mxu0
  %v12564 = vadd.f32 0.0, %v12563
  %v12565 = vpop.f32.mrb[0].mxu0
  %12566 = vmatprep.mubr.f32.mxu0 0.0
  %12567 = vmatmul.mubr.f32.gmra.mrb[0].mxu0 %v12194
  %v12568 = vpop.f32.mrb[0].mxu0
  %v12569 = vadd.f32 0.0, %v12568
  %v12570 = vpop.f32.mrb[0].mxu0
  %12571 = vmatprep.mubr.f32.mxu0 0.0
  %12572 = vmatmul.mubr.f32.gmra.mrb[0].mxu0 %v12197
  %v12573 = vpop.f32.mrb[0].mxu0
  %v12574 = vadd.f32 0.0, %v12573
  %v12575 = vpop.f32.mrb[0].mxu0
  %12576 = vmatprep.mubr.f32.mxu0 0.0
  %12577 = vmatmul.mubr.f32.gmra.mrb[0].mxu0 %v12200
  %v12578 = vpop.f32.mrb[0].mxu0
  %v12579 = vadd.f32 0.0, %v12578
  %v12580 = vpop.f32.mrb[0].mxu0
  %12581 = vmatprep.mubr.f32.mxu0 0.0
  %12582 = vmatmul.mubr.f32.gmra.mrb[0].mxu0 %v12203
  %v12583 = vpop.f32.mrb[0].mxu0
  %v12584 = vadd.f32 0.0, %v12583
  %v12585 = vpop.f32.mrb[0].mxu0
  %12586 = vmatprep.mubr.f32.mxu0 0.0
  %12587 = vmatmul.mubr.f32.gmra.mrb[0].mxu0 %v12206
  %v12588 = vpop.f32.mrb[0].mxu0
  %v12589 = vadd.f32 0.0, %v12588
  %v12590 = vpop.f32.mrb[0].mxu0
  %12591 = vmatprep.mubr.f32.mxu0 0.0
  %12592 = vmatmul.mubr.f32.gmra.mrb[0].mxu0 %v12209
  %v12593 = vpop.f32.mrb[0].mxu0
  %v12594 = vadd.f32 0.0, %v12593
  %v12595 = vpop.f32.mrb[0].mxu0
  %12596 = vmatprep.mubr.f32.mxu0 0.0
  %12597 = vmatmul.mubr.f32.gmra.mrb[0].mxu0 %v12212
  %v12598 = vpop.f32.mrb[0].mxu0
  %v12599 = vadd.f32 0.0, %v12598
  %v12600 = vpop.f32.mrb[0].mxu0
  %12601 = vdwg.mxu0
  %v12602 = vadd.f32 %v11892, %v12284
  %v12603 = vadd.f32 %v11893, %v12289
  %v12604 = vadd.f32 %v11894, %v12294
  %v12605 = vadd.f32 %v11895, %v12299
  %v12606 = vadd.f32 %v11896, %v12304
  %v12607 = vadd.f32 %v11897, %v12309
  %v12608 = vadd.f32 %v11898, %v12314
  %v12609 = vadd.f32 %v11899, %v12319
  %v12610 = vadd.f32 %v11900, %v12324
  %v12611 = vadd.f32 %v11901, %v12329
  %v12612 = vadd.f32 %v11902, %v12334
  %v12613 = vadd.f32 %v11903, %v12339
  %v12614 = vadd.f32 %v11904, %v12344
  %v12615 = vadd.f32 %v11905, %v12349
  %v12616 = vadd.f32 %v11906, %v12354
  %v12617 = vadd.f32 %v11907, %v12359
  %v12618 = vadd.f32 %v11908, %v12364
  %v12619 = vadd.f32 %v11909, %v12369
  %v12620 = vadd.f32 %v11910, %v12374
  %v12621 = vadd.f32 %v11911, %v12379
  %v12622 = vadd.f32 %v11912, %v12384
  %v12623 = vadd.f32 %v11913, %v12389
  %v12624 = vadd.f32 %v11914, %v12394
  %v12625 = vadd.f32 %v11915, %v12399
  %v12626 = vadd.f32 %v11916, %v12404
  %v12627 = vadd.f32 %v11917, %v12409
  %v12628 = vadd.f32 %v11918, %v12414
  %v12629 = vadd.f32 %v11919, %v12419
  %v12630 = vadd.f32 %v11920, %v12424
  %v12631 = vadd.f32 %v11921, %v12429
  %v12632 = vadd.f32 %v11922, %v12434
  %v12633 = vadd.f32 %v11923, %v12439
  %v12634 = vadd.f32 %v11924, %v12444
  %v12635 = vadd.f32 %v11925, %v12449
  %v12636 = vadd.f32 %v11926, %v12454
  %v12637 = vadd.f32 %v11927, %v12459
  %v12638 = vadd.f32 %v11928, %v12464
  %v12639 = vadd.f32 %v11929, %v12469
  %v12640 = vadd.f32 %v11930, %v12474
  %v12641 = vadd.f32 %v11931, %v12479
  %v12642 = vadd.f32 %v11932, %v12484
  %v12643 = vadd.f32 %v11933, %v12489
  %v12644 = vadd.f32 %v11934, %v12494
  %v12645 = vadd.f32 %v11935, %v12499
  %v12646 = vadd.f32 %v11936, %v12504
  %v12647 = vadd.f32 %v11937, %v12509
  %v12648 = vadd.f32 %v11938, %v12514
  %v12649 = vadd.f32 %v11939, %v12519
  %v12650 = vadd.f32 %v11940, %v12524
  %v12651 = vadd.f32 %v11941, %v12529
  %v12652 = vadd.f32 %v11942, %v12534
  %v12653 = vadd.f32 %v11943, %v12539
  %v12654 = vadd.f32 %v11944, %v12544
  %v12655 = vadd.f32 %v11945, %v12549
  %v12656 = vadd.f32 %v11946, %v12554
  %v12657 = vadd.f32 %v11947, %v12559
  %v12658 = vadd.f32 %v11948, %v12564
  %v12659 = vadd.f32 %v11949, %v12569
  %v12660 = vadd.f32 %v11950, %v12574
  %v12661 = vadd.f32 %v11951, %v12579
  %v12662 = vadd.f32 %v11952, %v12584
  %v12663 = vadd.f32 %v11953, %v12589
  %v12664 = vadd.f32 %v11954, %v12594
  %v12665 = vadd.f32 %v11955, %v12599
  %v12666 = vld [vmem:[%s4375 + $0x2] sm:$0xff]
  %v12667 = vld [vmem:[%s4375 + $0xa] sm:$0xff]
  %v12668 = vld [vmem:[%s4375 + $0x1a] sm:$0xff]
  %v12669 = vld [vmem:[%s4375 + $0x22] sm:$0xff]
  %v12670 = vld [vmem:[%s4375 + $0x32] sm:$0xff]
  %v12671 = vld [vmem:[%s4375 + $0x3a] sm:$0xff]
  %v12672 = vld [vmem:[%s4375 + $0x4a] sm:$0xff]
  %v12673 = vld [vmem:[%s4375 + $0x52] sm:$0xff]
  %v12674 = vld [vmem:[%s4375 + $0x62] sm:$0xff]
  %v12675 = vld [vmem:[%s4375 + $0x6a] sm:$0xff]
  %v12676 = vld [vmem:[%s4375 + $0x7a] sm:$0xff]
  %v12677 = vld [vmem:[%s4375 + $0x82] sm:$0xff]
  %v12678 = vld [vmem:[%s4375 + $0x92] sm:$0xff]
  %v12679 = vld [vmem:[%s4375 + $0x9a] sm:$0xff]
  %v12680 = vld [vmem:[%s4375 + $0xaa] sm:$0xff]
  %v12681 = vld [vmem:[%s4375 + $0xb2] sm:$0xff]
  %v12682 = vld [vmem:[%s4375 + $0xc2] sm:$0xff]
  %v12683 = vld [vmem:[%s4375 + $0xca] sm:$0xff]
  %v12684 = vld [vmem:[%s4375 + $0xda] sm:$0xff]
  %v12685 = vld [vmem:[%s4375 + $0xe2] sm:$0xff]
  %v12686 = vld [vmem:[%s4375 + $0xf2] sm:$0xff]
  %v12687 = vld [vmem:[%s4375 + $0xfa] sm:$0xff]
  %v12688 = vld [vmem:[%s4375 + $0x10a] sm:$0xff]
  %v12689 = vld [vmem:[%s4375 + $0x112] sm:$0xff]
  %v12690 = vld [vmem:[%s4375 + $0x122] sm:$0xff]
  %v12691 = vld [vmem:[%s4375 + $0x12a] sm:$0xff]
  %v12692 = vld [vmem:[%s4375 + $0x13a] sm:$0xff]
  %v12693 = vld [vmem:[%s4375 + $0x142] sm:$0xff]
  %v12694 = vld [vmem:[%s4375 + $0x152] sm:$0xff]
  %v12695 = vld [vmem:[%s4375 + $0x15a] sm:$0xff]
  %v12696 = vld [vmem:[%s4375 + $0x16a] sm:$0xff]
  %v12697 = vld [vmem:[%s4375 + $0x172] sm:$0xff]
  %v12698 = vld [vmem:[%s4375 + $0x1b2] sm:$0xff]
  %v12699 = vld [vmem:[%s4375 + $0x1ba] sm:$0xff]
  %v12700 = vld [vmem:[%s4375 + $0x1ca] sm:$0xff]
  %v12701 = vld [vmem:[%s4375 + $0x1d2] sm:$0xff]
  %v12702 = vld [vmem:[%s4375 + $0x1e2] sm:$0xff]
  %v12703 = vld [vmem:[%s4375 + $0x1ea] sm:$0xff]
  %v12704 = vld [vmem:[%s4375 + $0x1fa] sm:$0xff]
  %v12705 = vld [vmem:[%s4375 + $0x202] sm:$0xff]
  %v12706 = vld [vmem:[%s4375 + $0x212] sm:$0xff]
  %v12707 = vld [vmem:[%s4375 + $0x21a] sm:$0xff]
  %v12708 = vld [vmem:[%s4375 + $0x22a] sm:$0xff]
  %v12709 = vld [vmem:[%s4375 + $0x232] sm:$0xff]
  %v12710 = vld [vmem:[%s4375 + $0x242] sm:$0xff]
  %v12711 = vld [vmem:[%s4375 + $0x24a] sm:$0xff]
  %v12712 = vld [vmem:[%s4375 + $0x25a] sm:$0xff]
  %v12713 = vld [vmem:[%s4375 + $0x262] sm:$0xff]
  %v12714 = vld [vmem:[%s4375 + $0x272] sm:$0xff]
  %v12715 = vld [vmem:[%s4375 + $0x27a] sm:$0xff]
  %v12716 = vld [vmem:[%s4375 + $0x28a] sm:$0xff]
  %v12717 = vld [vmem:[%s4375 + $0x292] sm:$0xff]
  %v12718 = vld [vmem:[%s4375 + $0x2a2] sm:$0xff]
  %v12719 = vld [vmem:[%s4375 + $0x2aa] sm:$0xff]
  %v12720 = vld [vmem:[%s4375 + $0x2ba] sm:$0xff]
  %v12721 = vld [vmem:[%s4375 + $0x2c2] sm:$0xff]
  %v12722 = vld [vmem:[%s4375 + $0x2d2] sm:$0xff]
  %v12723 = vld [vmem:[%s4375 + $0x2da] sm:$0xff]
  %v12724 = vld [vmem:[%s4375 + $0x2ea] sm:$0xff]
  %v12725 = vld [vmem:[%s4375 + $0x2f2] sm:$0xff]
  %v12726 = vld [vmem:[%s4375 + $0x302] sm:$0xff]
  %v12727 = vld [vmem:[%s4375 + $0x30a] sm:$0xff]
  %v12728 = vld [vmem:[%s4375 + $0x31a] sm:$0xff]
  %v12729 = vld [vmem:[%s4375 + $0x322] sm:$0xff]
  %s12730 = scalar_lea.vmem %s4, 32
  %v12731 = vld [vmem:[%s12730] sm:$0xf]
  %v12733 = vsel %vm26, %v12666, 0
  %v12736 = vsel %vm26, %v12667, 0
  %v12739 = vsel %vm26, %v12668, 0
  %v12742 = vsel %vm26, %v12669, 0
  %v12745 = vsel %vm26, %v12670, 0
  %v12748 = vsel %vm26, %v12671, 0
  %v12751 = vsel %vm26, %v12672, 0
  %v12754 = vsel %vm26, %v12673, 0
  %v12757 = vsel %vm26, %v12674, 0
  %v12760 = vsel %vm26, %v12675, 0
  %v12763 = vsel %vm26, %v12676, 0
  %v12766 = vsel %vm26, %v12677, 0
  %v12769 = vsel %vm26, %v12678, 0
  %v12772 = vsel %vm26, %v12679, 0
  %v12775 = vsel %vm26, %v12680, 0
  %v12778 = vsel %vm26, %v12681, 0
  %v12781 = vsel %vm26, %v12682, 0
  %v12784 = vsel %vm26, %v12683, 0
  %v12787 = vsel %vm26, %v12684, 0
  %v12790 = vsel %vm26, %v12685, 0
  %v12793 = vsel %vm26, %v12686, 0
  %v12796 = vsel %vm26, %v12687, 0
  %v12799 = vsel %vm26, %v12688, 0
  %v12802 = vsel %vm26, %v12689, 0
  %v12805 = vsel %vm26, %v12690, 0
  %v12808 = vsel %vm26, %v12691, 0
  %v12811 = vsel %vm26, %v12692, 0
  %v12814 = vsel %vm26, %v12693, 0
  %v12817 = vsel %vm26, %v12694, 0
  %v12820 = vsel %vm26, %v12695, 0
  %v12823 = vsel %vm26, %v12696, 0
  %v12826 = vsel %vm26, %v12697, 0
  %v12829 = vsel %vm26, %v12698, 0
  %v12832 = vsel %vm26, %v12699, 0
  %v12835 = vsel %vm26, %v12700, 0
  %v12838 = vsel %vm26, %v12701, 0
  %v12841 = vsel %vm26, %v12702, 0
  %v12844 = vsel %vm26, %v12703, 0
  %v12847 = vsel %vm26, %v12704, 0
  %v12850 = vsel %vm26, %v12705, 0
  %v12853 = vsel %vm26, %v12706, 0
  %v12856 = vsel %vm26, %v12707, 0
  %v12859 = vsel %vm26, %v12708, 0
  %v12862 = vsel %vm26, %v12709, 0
  %v12865 = vsel %vm26, %v12710, 0
  %v12868 = vsel %vm26, %v12711, 0
  %v12871 = vsel %vm26, %v12712, 0
  %v12874 = vsel %vm26, %v12713, 0
  %v12877 = vsel %vm26, %v12714, 0
  %v12880 = vsel %vm26, %v12715, 0
  %v12883 = vsel %vm26, %v12716, 0
  %v12886 = vsel %vm26, %v12717, 0
  %v12889 = vsel %vm26, %v12718, 0
  %v12892 = vsel %vm26, %v12719, 0
  %v12895 = vsel %vm26, %v12720, 0
  %v12898 = vsel %vm26, %v12721, 0
  %v12901 = vsel %vm26, %v12722, 0
  %v12904 = vsel %vm26, %v12723, 0
  %v12907 = vsel %vm26, %v12724, 0
  %v12910 = vsel %vm26, %v12725, 0
  %v12913 = vsel %vm26, %v12726, 0
  %v12916 = vsel %vm26, %v12727, 0
  %v12919 = vsel %vm26, %v12728, 0
  %v12922 = vsel %vm26, %v12729, 0
  %v12925 = vsel %vm566, %v12731, 0
  %12927 = vmatprep.subr.mxu0 0.0
  %12928 = vmatpush1.msra.mxu0 %v12925
  %12929 = vmatprep.subr.mxu0 0.0
  %12930 = vmatpush1.msra.mxu0 0.0
  %12931 = vmatprep.subr.mxu0 0.0
  %12932 = vmatpush1.msra.mxu0 0.0
  %12933 = vmatprep.subr.mxu0 0.0
  %12934 = vmatpush1.msra.mxu0 0.0
  %12935 = vmatprep.subr.mxu0 0.0
  %12936 = vmatpush1.msra.mxu0 0.0
  %12937 = vmatprep.subr.mxu0 0.0
  %12938 = vmatpush1.msra.mxu0 0.0
  %12939 = vmatprep.subr.mxu0 0.0
  %12940 = vmatpush1.msra.mxu0 0.0
  %12941 = vmatprep.subr.mxu0 0.0
  %12942 = vmatpush1.msra.mxu0 0.0
  %12943 = vmatprep.subr.mxu0 0.0
  %12944 = vmatpush1.msra.mxu0 0.0
  %12945 = vmatprep.subr.mxu0 0.0
  %12946 = vmatpush1.msra.mxu0 0.0
  %12947 = vmatprep.subr.mxu0 0.0
  %12948 = vmatpush1.msra.mxu0 0.0
  %12949 = vmatprep.subr.mxu0 0.0
  %12950 = vmatpush1.msra.mxu0 0.0
  %12951 = vmatprep.subr.mxu0 0.0
  %12952 = vmatpush1.msra.mxu0 0.0
  %12953 = vmatprep.subr.mxu0 0.0
  %12954 = vmatpush1.msra.mxu0 0.0
  %12955 = vmatprep.subr.mxu0 0.0
  %12956 = vmatpush1.msra.mxu0 0.0
  %12957 = vmatprep.subr.mxu0 0.0
  %12958 = vmatpush1.msra.mxu0 0.0
  %12959 = vmatprep.subr.mxu0 0.0
  %12960 = vmatpush1.msra.mxu0 0.0
  %12961 = vmatprep.subr.mxu0 0.0
  %12962 = vmatpush1.msra.mxu0 0.0
  %12963 = vmatprep.subr.mxu0 0.0
  %12964 = vmatpush1.msra.mxu0 0.0
  %12965 = vmatprep.subr.mxu0 0.0
  %12966 = vmatpush1.msra.mxu0 0.0
  %12967 = vmatprep.subr.mxu0 0.0
  %12968 = vmatpush1.msra.mxu0 0.0
  %12969 = vmatprep.subr.mxu0 0.0
  %12970 = vmatpush1.msra.mxu0 0.0
  %12971 = vmatprep.subr.mxu0 0.0
  %12972 = vmatpush1.msra.mxu0 0.0
  %12973 = vmatprep.subr.mxu0 0.0
  %12974 = vmatpush1.msra.mxu0 0.0
  %12975 = vmatprep.subr.mxu0 0.0
  %12976 = vmatpush1.msra.mxu0 0.0
  %12977 = vmatprep.subr.mxu0 0.0
  %12978 = vmatpush1.msra.mxu0 0.0
  %12979 = vmatprep.subr.mxu0 0.0
  %12980 = vmatpush1.msra.mxu0 0.0
  %12981 = vmatprep.subr.mxu0 0.0
  %12982 = vmatpush1.msra.mxu0 0.0
  %12983 = vmatprep.subr.mxu0 0.0
  %12984 = vmatpush1.msra.mxu0 0.0
  %12985 = vmatprep.subr.mxu0 0.0
  %12986 = vmatpush1.msra.mxu0 0.0
  %12987 = vmatprep.subr.mxu0 0.0
  %12988 = vmatpush1.msra.mxu0 0.0
  %12989 = vmatprep.subr.mxu0 0.0
  %12990 = vmatpush1.msra.mxu0 0.0
  %12991 = vmatprep.mubr.f32.mxu0 0.0
  %12992 = vmatmul.mubr.f32.gmra.mrb[0].mxu0 %v12733
  %v12993 = vpop.f32.mrb[0].mxu0
  %v12994 = vadd.f32 0.0, %v12993
  %v12995 = vpop.f32.mrb[0].mxu0
  %12996 = vmatprep.mubr.f32.mxu0 0.0
  %12997 = vmatmul.mubr.f32.gmra.mrb[0].mxu0 %v12736
  %v12998 = vpop.f32.mrb[0].mxu0
  %v12999 = vadd.f32 0.0, %v12998
  %v13000 = vpop.f32.mrb[0].mxu0
  %13001 = vmatprep.mubr.f32.mxu0 0.0
  %13002 = vmatmul.mubr.f32.gmra.mrb[0].mxu0 %v12739
  %v13003 = vpop.f32.mrb[0].mxu0
  %v13004 = vadd.f32 0.0, %v13003
  %v13005 = vpop.f32.mrb[0].mxu0
  %13006 = vmatprep.mubr.f32.mxu0 0.0
  %13007 = vmatmul.mubr.f32.gmra.mrb[0].mxu0 %v12742
  %v13008 = vpop.f32.mrb[0].mxu0
  %v13009 = vadd.f32 0.0, %v13008
  %v13010 = vpop.f32.mrb[0].mxu0
  %13011 = vmatprep.mubr.f32.mxu0 0.0
  %13012 = vmatmul.mubr.f32.gmra.mrb[0].mxu0 %v12745
  %v13013 = vpop.f32.mrb[0].mxu0
  %v13014 = vadd.f32 0.0, %v13013
  %v13015 = vpop.f32.mrb[0].mxu0
  %13016 = vmatprep.mubr.f32.mxu0 0.0
  %13017 = vmatmul.mubr.f32.gmra.mrb[0].mxu0 %v12748
  %v13018 = vpop.f32.mrb[0].mxu0
  %v13019 = vadd.f32 0.0, %v13018
  %v13020 = vpop.f32.mrb[0].mxu0
  %13021 = vmatprep.mubr.f32.mxu0 0.0
  %13022 = vmatmul.mubr.f32.gmra.mrb[0].mxu0 %v12751
  %v13023 = vpop.f32.mrb[0].mxu0
  %v13024 = vadd.f32 0.0, %v13023
  %v13025 = vpop.f32.mrb[0].mxu0
  %13026 = vmatprep.mubr.f32.mxu0 0.0
  %13027 = vmatmul.mubr.f32.gmra.mrb[0].mxu0 %v12754
  %v13028 = vpop.f32.mrb[0].mxu0
  %v13029 = vadd.f32 0.0, %v13028
  %v13030 = vpop.f32.mrb[0].mxu0
  %13031 = vmatprep.mubr.f32.mxu0 0.0
  %13032 = vmatmul.mubr.f32.gmra.mrb[0].mxu0 %v12757
  %v13033 = vpop.f32.mrb[0].mxu0
  %v13034 = vadd.f32 0.0, %v13033
  %v13035 = vpop.f32.mrb[0].mxu0
  %13036 = vmatprep.mubr.f32.mxu0 0.0
  %13037 = vmatmul.mubr.f32.gmra.mrb[0].mxu0 %v12760
  %v13038 = vpop.f32.mrb[0].mxu0
  %v13039 = vadd.f32 0.0, %v13038
  %v13040 = vpop.f32.mrb[0].mxu0
  %13041 = vmatprep.mubr.f32.mxu0 0.0
  %13042 = vmatmul.mubr.f32.gmra.mrb[0].mxu0 %v12763
  %v13043 = vpop.f32.mrb[0].mxu0
  %v13044 = vadd.f32 0.0, %v13043
  %v13045 = vpop.f32.mrb[0].mxu0
  %13046 = vmatprep.mubr.f32.mxu0 0.0
  %13047 = vmatmul.mubr.f32.gmra.mrb[0].mxu0 %v12766
  %v13048 = vpop.f32.mrb[0].mxu0
  %v13049 = vadd.f32 0.0, %v13048
  %v13050 = vpop.f32.mrb[0].mxu0
  %13051 = vmatprep.mubr.f32.mxu0 0.0
  %13052 = vmatmul.mubr.f32.gmra.mrb[0].mxu0 %v12769
  %v13053 = vpop.f32.mrb[0].mxu0
  %v13054 = vadd.f32 0.0, %v13053
  %v13055 = vpop.f32.mrb[0].mxu0
  %13056 = vmatprep.mubr.f32.mxu0 0.0
  %13057 = vmatmul.mubr.f32.gmra.mrb[0].mxu0 %v12772
  %v13058 = vpop.f32.mrb[0].mxu0
  %v13059 = vadd.f32 0.0, %v13058
  %v13060 = vpop.f32.mrb[0].mxu0
  %13061 = vmatprep.mubr.f32.mxu0 0.0
  %13062 = vmatmul.mubr.f32.gmra.mrb[0].mxu0 %v12775
  %v13063 = vpop.f32.mrb[0].mxu0
  %v13064 = vadd.f32 0.0, %v13063
  %v13065 = vpop.f32.mrb[0].mxu0
  %13066 = vmatprep.mubr.f32.mxu0 0.0
  %13067 = vmatmul.mubr.f32.gmra.mrb[0].mxu0 %v12778
  %v13068 = vpop.f32.mrb[0].mxu0
  %v13069 = vadd.f32 0.0, %v13068
  %v13070 = vpop.f32.mrb[0].mxu0
  %13071 = vmatprep.mubr.f32.mxu0 0.0
  %13072 = vmatmul.mubr.f32.gmra.mrb[0].mxu0 %v12781
  %v13073 = vpop.f32.mrb[0].mxu0
  %v13074 = vadd.f32 0.0, %v13073
  %v13075 = vpop.f32.mrb[0].mxu0
  %13076 = vmatprep.mubr.f32.mxu0 0.0
  %13077 = vmatmul.mubr.f32.gmra.mrb[0].mxu0 %v12784
  %v13078 = vpop.f32.mrb[0].mxu0
  %v13079 = vadd.f32 0.0, %v13078
  %v13080 = vpop.f32.mrb[0].mxu0
  %13081 = vmatprep.mubr.f32.mxu0 0.0
  %13082 = vmatmul.mubr.f32.gmra.mrb[0].mxu0 %v12787
  %v13083 = vpop.f32.mrb[0].mxu0
  %v13084 = vadd.f32 0.0, %v13083
  %v13085 = vpop.f32.mrb[0].mxu0
  %13086 = vmatprep.mubr.f32.mxu0 0.0
  %13087 = vmatmul.mubr.f32.gmra.mrb[0].mxu0 %v12790
  %v13088 = vpop.f32.mrb[0].mxu0
  %v13089 = vadd.f32 0.0, %v13088
  %v13090 = vpop.f32.mrb[0].mxu0
  %13091 = vmatprep.mubr.f32.mxu0 0.0
  %13092 = vmatmul.mubr.f32.gmra.mrb[0].mxu0 %v12793
  %v13093 = vpop.f32.mrb[0].mxu0
  %v13094 = vadd.f32 0.0, %v13093
  %v13095 = vpop.f32.mrb[0].mxu0
  %13096 = vmatprep.mubr.f32.mxu0 0.0
  %13097 = vmatmul.mubr.f32.gmra.mrb[0].mxu0 %v12796
  %v13098 = vpop.f32.mrb[0].mxu0
  %v13099 = vadd.f32 0.0, %v13098
  %v13100 = vpop.f32.mrb[0].mxu0
  %13101 = vmatprep.mubr.f32.mxu0 0.0
  %13102 = vmatmul.mubr.f32.gmra.mrb[0].mxu0 %v12799
  %v13103 = vpop.f32.mrb[0].mxu0
  %v13104 = vadd.f32 0.0, %v13103
  %v13105 = vpop.f32.mrb[0].mxu0
  %13106 = vmatprep.mubr.f32.mxu0 0.0
  %13107 = vmatmul.mubr.f32.gmra.mrb[0].mxu0 %v12802
  %v13108 = vpop.f32.mrb[0].mxu0
  %v13109 = vadd.f32 0.0, %v13108
  %v13110 = vpop.f32.mrb[0].mxu0
  %13111 = vmatprep.mubr.f32.mxu0 0.0
  %13112 = vmatmul.mubr.f32.gmra.mrb[0].mxu0 %v12805
  %v13113 = vpop.f32.mrb[0].mxu0
  %v13114 = vadd.f32 0.0, %v13113
  %v13115 = vpop.f32.mrb[0].mxu0
  %13116 = vmatprep.mubr.f32.mxu0 0.0
  %13117 = vmatmul.mubr.f32.gmra.mrb[0].mxu0 %v12808
  %v13118 = vpop.f32.mrb[0].mxu0
  %v13119 = vadd.f32 0.0, %v13118
  %v13120 = vpop.f32.mrb[0].mxu0
  %13121 = vmatprep.mubr.f32.mxu0 0.0
  %13122 = vmatmul.mubr.f32.gmra.mrb[0].mxu0 %v12811
  %v13123 = vpop.f32.mrb[0].mxu0
  %v13124 = vadd.f32 0.0, %v13123
  %v13125 = vpop.f32.mrb[0].mxu0
  %13126 = vmatprep.mubr.f32.mxu0 0.0
  %13127 = vmatmul.mubr.f32.gmra.mrb[0].mxu0 %v12814
  %v13128 = vpop.f32.mrb[0].mxu0
  %v13129 = vadd.f32 0.0, %v13128
  %v13130 = vpop.f32.mrb[0].mxu0
  %13131 = vmatprep.mubr.f32.mxu0 0.0
  %13132 = vmatmul.mubr.f32.gmra.mrb[0].mxu0 %v12817
  %v13133 = vpop.f32.mrb[0].mxu0
  %v13134 = vadd.f32 0.0, %v13133
  %v13135 = vpop.f32.mrb[0].mxu0
  %13136 = vmatprep.mubr.f32.mxu0 0.0
  %13137 = vmatmul.mubr.f32.gmra.mrb[0].mxu0 %v12820
  %v13138 = vpop.f32.mrb[0].mxu0
  %v13139 = vadd.f32 0.0, %v13138
  %v13140 = vpop.f32.mrb[0].mxu0
  %13141 = vmatprep.mubr.f32.mxu0 0.0
  %13142 = vmatmul.mubr.f32.gmra.mrb[0].mxu0 %v12823
  %v13143 = vpop.f32.mrb[0].mxu0
  %v13144 = vadd.f32 0.0, %v13143
  %v13145 = vpop.f32.mrb[0].mxu0
  %13146 = vmatprep.mubr.f32.mxu0 0.0
  %13147 = vmatmul.mubr.f32.gmra.mrb[0].mxu0 %v12826
  %v13148 = vpop.f32.mrb[0].mxu0
  %v13149 = vadd.f32 0.0, %v13148
  %v13150 = vpop.f32.mrb[0].mxu0
  %13151 = vmatprep.mubr.f32.mxu0 0.0
  %13152 = vmatmul.mubr.f32.gmra.mrb[0].mxu0 %v12829
  %v13153 = vpop.f32.mrb[0].mxu0
  %v13154 = vadd.f32 0.0, %v13153
  %v13155 = vpop.f32.mrb[0].mxu0
  %13156 = vmatprep.mubr.f32.mxu0 0.0
  %13157 = vmatmul.mubr.f32.gmra.mrb[0].mxu0 %v12832
  %v13158 = vpop.f32.mrb[0].mxu0
  %v13159 = vadd.f32 0.0, %v13158
  %v13160 = vpop.f32.mrb[0].mxu0
  %13161 = vmatprep.mubr.f32.mxu0 0.0
  %13162 = vmatmul.mubr.f32.gmra.mrb[0].mxu0 %v12835
  %v13163 = vpop.f32.mrb[0].mxu0
  %v13164 = vadd.f32 0.0, %v13163
  %v13165 = vpop.f32.mrb[0].mxu0
  %13166 = vmatprep.mubr.f32.mxu0 0.0
  %13167 = vmatmul.mubr.f32.gmra.mrb[0].mxu0 %v12838
  %v13168 = vpop.f32.mrb[0].mxu0
  %v13169 = vadd.f32 0.0, %v13168
  %v13170 = vpop.f32.mrb[0].mxu0
  %13171 = vmatprep.mubr.f32.mxu0 0.0
  %13172 = vmatmul.mubr.f32.gmra.mrb[0].mxu0 %v12841
  %v13173 = vpop.f32.mrb[0].mxu0
  %v13174 = vadd.f32 0.0, %v13173
  %v13175 = vpop.f32.mrb[0].mxu0
  %13176 = vmatprep.mubr.f32.mxu0 0.0
  %13177 = vmatmul.mubr.f32.gmra.mrb[0].mxu0 %v12844
  %v13178 = vpop.f32.mrb[0].mxu0
  %v13179 = vadd.f32 0.0, %v13178
  %v13180 = vpop.f32.mrb[0].mxu0
  %13181 = vmatprep.mubr.f32.mxu0 0.0
  %13182 = vmatmul.mubr.f32.gmra.mrb[0].mxu0 %v12847
  %v13183 = vpop.f32.mrb[0].mxu0
  %v13184 = vadd.f32 0.0, %v13183
  %v13185 = vpop.f32.mrb[0].mxu0
  %13186 = vmatprep.mubr.f32.mxu0 0.0
  %13187 = vmatmul.mubr.f32.gmra.mrb[0].mxu0 %v12850
  %v13188 = vpop.f32.mrb[0].mxu0
  %v13189 = vadd.f32 0.0, %v13188
  %v13190 = vpop.f32.mrb[0].mxu0
  %13191 = vmatprep.mubr.f32.mxu0 0.0
  %13192 = vmatmul.mubr.f32.gmra.mrb[0].mxu0 %v12853
  %v13193 = vpop.f32.mrb[0].mxu0
  %v13194 = vadd.f32 0.0, %v13193
  %v13195 = vpop.f32.mrb[0].mxu0
  %13196 = vmatprep.mubr.f32.mxu0 0.0
  %13197 = vmatmul.mubr.f32.gmra.mrb[0].mxu0 %v12856
  %v13198 = vpop.f32.mrb[0].mxu0
  %v13199 = vadd.f32 0.0, %v13198
  %v13200 = vpop.f32.mrb[0].mxu0
  %13201 = vmatprep.mubr.f32.mxu0 0.0
  %13202 = vmatmul.mubr.f32.gmra.mrb[0].mxu0 %v12859
  %v13203 = vpop.f32.mrb[0].mxu0
  %v13204 = vadd.f32 0.0, %v13203
  %v13205 = vpop.f32.mrb[0].mxu0
  %13206 = vmatprep.mubr.f32.mxu0 0.0
  %13207 = vmatmul.mubr.f32.gmra.mrb[0].mxu0 %v12862
  %v13208 = vpop.f32.mrb[0].mxu0
  %v13209 = vadd.f32 0.0, %v13208
  %v13210 = vpop.f32.mrb[0].mxu0
  %13211 = vmatprep.mubr.f32.mxu0 0.0
  %13212 = vmatmul.mubr.f32.gmra.mrb[0].mxu0 %v12865
  %v13213 = vpop.f32.mrb[0].mxu0
  %v13214 = vadd.f32 0.0, %v13213
  %v13215 = vpop.f32.mrb[0].mxu0
  %13216 = vmatprep.mubr.f32.mxu0 0.0
  %13217 = vmatmul.mubr.f32.gmra.mrb[0].mxu0 %v12868
  %v13218 = vpop.f32.mrb[0].mxu0
  %v13219 = vadd.f32 0.0, %v13218
  %v13220 = vpop.f32.mrb[0].mxu0
  %13221 = vmatprep.mubr.f32.mxu0 0.0
  %13222 = vmatmul.mubr.f32.gmra.mrb[0].mxu0 %v12871
  %v13223 = vpop.f32.mrb[0].mxu0
  %v13224 = vadd.f32 0.0, %v13223
  %v13225 = vpop.f32.mrb[0].mxu0
  %13226 = vmatprep.mubr.f32.mxu0 0.0
  %13227 = vmatmul.mubr.f32.gmra.mrb[0].mxu0 %v12874
  %v13228 = vpop.f32.mrb[0].mxu0
  %v13229 = vadd.f32 0.0, %v13228
  %v13230 = vpop.f32.mrb[0].mxu0
  %13231 = vmatprep.mubr.f32.mxu0 0.0
  %13232 = vmatmul.mubr.f32.gmra.mrb[0].mxu0 %v12877
  %v13233 = vpop.f32.mrb[0].mxu0
  %v13234 = vadd.f32 0.0, %v13233
  %v13235 = vpop.f32.mrb[0].mxu0
  %13236 = vmatprep.mubr.f32.mxu0 0.0
  %13237 = vmatmul.mubr.f32.gmra.mrb[0].mxu0 %v12880
  %v13238 = vpop.f32.mrb[0].mxu0
  %v13239 = vadd.f32 0.0, %v13238
  %v13240 = vpop.f32.mrb[0].mxu0
  %13241 = vmatprep.mubr.f32.mxu0 0.0
  %13242 = vmatmul.mubr.f32.gmra.mrb[0].mxu0 %v12883
  %v13243 = vpop.f32.mrb[0].mxu0
  %v13244 = vadd.f32 0.0, %v13243
  %v13245 = vpop.f32.mrb[0].mxu0
  %13246 = vmatprep.mubr.f32.mxu0 0.0
  %13247 = vmatmul.mubr.f32.gmra.mrb[0].mxu0 %v12886
  %v13248 = vpop.f32.mrb[0].mxu0
  %v13249 = vadd.f32 0.0, %v13248
  %v13250 = vpop.f32.mrb[0].mxu0
  %13251 = vmatprep.mubr.f32.mxu0 0.0
  %13252 = vmatmul.mubr.f32.gmra.mrb[0].mxu0 %v12889
  %v13253 = vpop.f32.mrb[0].mxu0
  %v13254 = vadd.f32 0.0, %v13253
  %v13255 = vpop.f32.mrb[0].mxu0
  %13256 = vmatprep.mubr.f32.mxu0 0.0
  %13257 = vmatmul.mubr.f32.gmra.mrb[0].mxu0 %v12892
  %v13258 = vpop.f32.mrb[0].mxu0
  %v13259 = vadd.f32 0.0, %v13258
  %v13260 = vpop.f32.mrb[0].mxu0
  %13261 = vmatprep.mubr.f32.mxu0 0.0
  %13262 = vmatmul.mubr.f32.gmra.mrb[0].mxu0 %v12895
  %v13263 = vpop.f32.mrb[0].mxu0
  %v13264 = vadd.f32 0.0, %v13263
  %v13265 = vpop.f32.mrb[0].mxu0
  %13266 = vmatprep.mubr.f32.mxu0 0.0
  %13267 = vmatmul.mubr.f32.gmra.mrb[0].mxu0 %v12898
  %v13268 = vpop.f32.mrb[0].mxu0
  %v13269 = vadd.f32 0.0, %v13268
  %v13270 = vpop.f32.mrb[0].mxu0
  %13271 = vmatprep.mubr.f32.mxu0 0.0
  %13272 = vmatmul.mubr.f32.gmra.mrb[0].mxu0 %v12901
  %v13273 = vpop.f32.mrb[0].mxu0
  %v13274 = vadd.f32 0.0, %v13273
  %v13275 = vpop.f32.mrb[0].mxu0
  %13276 = vmatprep.mubr.f32.mxu0 0.0
  %13277 = vmatmul.mubr.f32.gmra.mrb[0].mxu0 %v12904
  %v13278 = vpop.f32.mrb[0].mxu0
  %v13279 = vadd.f32 0.0, %v13278
  %v13280 = vpop.f32.mrb[0].mxu0
  %13281 = vmatprep.mubr.f32.mxu0 0.0
  %13282 = vmatmul.mubr.f32.gmra.mrb[0].mxu0 %v12907
  %v13283 = vpop.f32.mrb[0].mxu0
  %v13284 = vadd.f32 0.0, %v13283
  %v13285 = vpop.f32.mrb[0].mxu0
  %13286 = vmatprep.mubr.f32.mxu0 0.0
  %13287 = vmatmul.mubr.f32.gmra.mrb[0].mxu0 %v12910
  %v13288 = vpop.f32.mrb[0].mxu0
  %v13289 = vadd.f32 0.0, %v13288
  %v13290 = vpop.f32.mrb[0].mxu0
  %13291 = vmatprep.mubr.f32.mxu0 0.0
  %13292 = vmatmul.mubr.f32.gmra.mrb[0].mxu0 %v12913
  %v13293 = vpop.f32.mrb[0].mxu0
  %v13294 = vadd.f32 0.0, %v13293
  %v13295 = vpop.f32.mrb[0].mxu0
  %13296 = vmatprep.mubr.f32.mxu0 0.0
  %13297 = vmatmul.mubr.f32.gmra.mrb[0].mxu0 %v12916
  %v13298 = vpop.f32.mrb[0].mxu0
  %v13299 = vadd.f32 0.0, %v13298
  %v13300 = vpop.f32.mrb[0].mxu0
  %13301 = vmatprep.mubr.f32.mxu0 0.0
  %13302 = vmatmul.mubr.f32.gmra.mrb[0].mxu0 %v12919
  %v13303 = vpop.f32.mrb[0].mxu0
  %v13304 = vadd.f32 0.0, %v13303
  %v13305 = vpop.f32.mrb[0].mxu0
  %13306 = vmatprep.mubr.f32.mxu0 0.0
  %13307 = vmatmul.mubr.f32.gmra.mrb[0].mxu0 %v12922
  %v13308 = vpop.f32.mrb[0].mxu0
  %v13309 = vadd.f32 0.0, %v13308
  %v13310 = vpop.f32.mrb[0].mxu0
  %13311 = vdwg.mxu0
  %v13312 = vadd.f32 %v12602, %v12994
  %v13313 = vadd.f32 %v12603, %v12999
  %v13314 = vadd.f32 %v12604, %v13004
  %v13315 = vadd.f32 %v12605, %v13009
  %v13316 = vadd.f32 %v12606, %v13014
  %v13317 = vadd.f32 %v12607, %v13019
  %v13318 = vadd.f32 %v12608, %v13024
  %v13319 = vadd.f32 %v12609, %v13029
  %v13320 = vadd.f32 %v12610, %v13034
  %v13321 = vadd.f32 %v12611, %v13039
  %v13322 = vadd.f32 %v12612, %v13044
  %v13323 = vadd.f32 %v12613, %v13049
  %v13324 = vadd.f32 %v12614, %v13054
  %v13325 = vadd.f32 %v12615, %v13059
  %v13326 = vadd.f32 %v12616, %v13064
  %v13327 = vadd.f32 %v12617, %v13069
  %v13328 = vadd.f32 %v12618, %v13074
  %v13329 = vadd.f32 %v12619, %v13079
  %v13330 = vadd.f32 %v12620, %v13084
  %v13331 = vadd.f32 %v12621, %v13089
  %v13332 = vadd.f32 %v12622, %v13094
  %v13333 = vadd.f32 %v12623, %v13099
  %v13334 = vadd.f32 %v12624, %v13104
  %v13335 = vadd.f32 %v12625, %v13109
  %v13336 = vadd.f32 %v12626, %v13114
  %v13337 = vadd.f32 %v12627, %v13119
  %v13338 = vadd.f32 %v12628, %v13124
  %v13339 = vadd.f32 %v12629, %v13129
  %v13340 = vadd.f32 %v12630, %v13134
  %v13341 = vadd.f32 %v12631, %v13139
  %v13342 = vadd.f32 %v12632, %v13144
  %v13343 = vadd.f32 %v12633, %v13149
  %v13344 = vadd.f32 %v12634, %v13154
  %v13345 = vadd.f32 %v12635, %v13159
  %v13346 = vadd.f32 %v12636, %v13164
  %v13347 = vadd.f32 %v12637, %v13169
  %v13348 = vadd.f32 %v12638, %v13174
  %v13349 = vadd.f32 %v12639, %v13179
  %v13350 = vadd.f32 %v12640, %v13184
  %v13351 = vadd.f32 %v12641, %v13189
  %v13352 = vadd.f32 %v12642, %v13194
  %v13353 = vadd.f32 %v12643, %v13199
  %v13354 = vadd.f32 %v12644, %v13204
  %v13355 = vadd.f32 %v12645, %v13209
  %v13356 = vadd.f32 %v12646, %v13214
  %v13357 = vadd.f32 %v12647, %v13219
  %v13358 = vadd.f32 %v12648, %v13224
  %v13359 = vadd.f32 %v12649, %v13229
  %v13360 = vadd.f32 %v12650, %v13234
  %v13361 = vadd.f32 %v12651, %v13239
  %v13362 = vadd.f32 %v12652, %v13244
  %v13363 = vadd.f32 %v12653, %v13249
  %v13364 = vadd.f32 %v12654, %v13254
  %v13365 = vadd.f32 %v12655, %v13259
  %v13366 = vadd.f32 %v12656, %v13264
  %v13367 = vadd.f32 %v12657, %v13269
  %v13368 = vadd.f32 %v12658, %v13274
  %v13369 = vadd.f32 %v12659, %v13279
  %v13370 = vadd.f32 %v12660, %v13284
  %v13371 = vadd.f32 %v12661, %v13289
  %v13372 = vadd.f32 %v12662, %v13294
  %v13373 = vadd.f32 %v12663, %v13299
  %v13374 = vadd.f32 %v12664, %v13304
  %v13375 = vadd.f32 %v12665, %v13309
  %v13376 = vsel %vm26, %v13312, 0.0
  %v13377 = vsel %vm26, %v13313, 0.0
  %v13378 = vadd.f32 %v13376, %v13377
  %v13379 = vsel %vm26, %v13314, 0.0
  %v13380 = vadd.f32 %v13378, %v13379
  %v13381 = vsel %vm26, %v13315, 0.0
  %v13382 = vadd.f32 %v13380, %v13381
  %v13383 = vsel %vm26, %v13316, 0.0
  %v13384 = vadd.f32 %v13382, %v13383
  %v13385 = vsel %vm26, %v13317, 0.0
  %v13386 = vadd.f32 %v13384, %v13385
  %v13387 = vsel %vm26, %v13318, 0.0
  %v13388 = vadd.f32 %v13386, %v13387
  %v13389 = vsel %vm26, %v13319, 0.0
  %v13390 = vadd.f32 %v13388, %v13389
  %v13391 = vsel %vm26, %v13320, 0.0
  %v13392 = vadd.f32 %v13390, %v13391
  %v13393 = vsel %vm26, %v13321, 0.0
  %v13394 = vadd.f32 %v13392, %v13393
  %v13395 = vsel %vm26, %v13322, 0.0
  %v13396 = vadd.f32 %v13394, %v13395
  %v13397 = vsel %vm26, %v13323, 0.0
  %v13398 = vadd.f32 %v13396, %v13397
  %v13399 = vsel %vm26, %v13324, 0.0
  %v13400 = vadd.f32 %v13398, %v13399
  %v13401 = vsel %vm26, %v13325, 0.0
  %v13402 = vadd.f32 %v13400, %v13401
  %v13403 = vsel %vm26, %v13326, 0.0
  %v13404 = vadd.f32 %v13402, %v13403
  %v13405 = vsel %vm26, %v13327, 0.0
  %v13406 = vadd.f32 %v13404, %v13405
  %v13407 = vsel %vm26, %v13328, 0.0
  %v13408 = vadd.f32 %v13406, %v13407
  %v13409 = vsel %vm26, %v13329, 0.0
  %v13410 = vadd.f32 %v13408, %v13409
  %v13411 = vsel %vm26, %v13330, 0.0
  %v13412 = vadd.f32 %v13410, %v13411
  %v13413 = vsel %vm26, %v13331, 0.0
  %v13414 = vadd.f32 %v13412, %v13413
  %v13415 = vsel %vm26, %v13332, 0.0
  %v13416 = vadd.f32 %v13414, %v13415
  %v13417 = vsel %vm26, %v13333, 0.0
  %v13418 = vadd.f32 %v13416, %v13417
  %v13419 = vsel %vm26, %v13334, 0.0
  %v13420 = vadd.f32 %v13418, %v13419
  %v13421 = vsel %vm26, %v13335, 0.0
  %v13422 = vadd.f32 %v13420, %v13421
  %v13423 = vsel %vm26, %v13336, 0.0
  %v13424 = vadd.f32 %v13422, %v13423
  %v13425 = vsel %vm26, %v13337, 0.0
  %v13426 = vadd.f32 %v13424, %v13425
  %v13427 = vsel %vm26, %v13338, 0.0
  %v13428 = vadd.f32 %v13426, %v13427
  %v13429 = vsel %vm26, %v13339, 0.0
  %v13430 = vadd.f32 %v13428, %v13429
  %v13431 = vsel %vm26, %v13340, 0.0
  %v13432 = vadd.f32 %v13430, %v13431
  %v13433 = vsel %vm26, %v13341, 0.0
  %v13434 = vadd.f32 %v13432, %v13433
  %v13435 = vsel %vm26, %v13342, 0.0
  %v13436 = vadd.f32 %v13434, %v13435
  %v13437 = vsel %vm26, %v13343, 0.0
  %v13438 = vadd.f32 %v13436, %v13437
  %v13439 = vsel %vm26, %v13344, 0.0
  %v13440 = vadd.f32 %v13438, %v13439
  %v13441 = vsel %vm26, %v13345, 0.0
  %v13442 = vadd.f32 %v13440, %v13441
  %v13443 = vsel %vm26, %v13346, 0.0
  %v13444 = vadd.f32 %v13442, %v13443
  %v13445 = vsel %vm26, %v13347, 0.0
  %v13446 = vadd.f32 %v13444, %v13445
  %v13447 = vsel %vm26, %v13348, 0.0
  %v13448 = vadd.f32 %v13446, %v13447
  %v13449 = vsel %vm26, %v13349, 0.0
  %v13450 = vadd.f32 %v13448, %v13449
  %v13451 = vsel %vm26, %v13350, 0.0
  %v13452 = vadd.f32 %v13450, %v13451
  %v13453 = vsel %vm26, %v13351, 0.0
  %v13454 = vadd.f32 %v13452, %v13453
  %v13455 = vsel %vm26, %v13352, 0.0
  %v13456 = vadd.f32 %v13454, %v13455
  %v13457 = vsel %vm26, %v13353, 0.0
  %v13458 = vadd.f32 %v13456, %v13457
  %v13459 = vsel %vm26, %v13354, 0.0
  %v13460 = vadd.f32 %v13458, %v13459
  %v13461 = vsel %vm26, %v13355, 0.0
  %v13462 = vadd.f32 %v13460, %v13461
  %v13463 = vsel %vm26, %v13356, 0.0
  %v13464 = vadd.f32 %v13462, %v13463
  %v13465 = vsel %vm26, %v13357, 0.0
  %v13466 = vadd.f32 %v13464, %v13465
  %v13467 = vsel %vm26, %v13358, 0.0
  %v13468 = vadd.f32 %v13466, %v13467
  %v13469 = vsel %vm26, %v13359, 0.0
  %v13470 = vadd.f32 %v13468, %v13469
  %v13471 = vsel %vm26, %v13360, 0.0
  %v13472 = vadd.f32 %v13470, %v13471
  %v13473 = vsel %vm26, %v13361, 0.0
  %v13474 = vadd.f32 %v13472, %v13473
  %v13475 = vsel %vm26, %v13362, 0.0
  %v13476 = vadd.f32 %v13474, %v13475
  %v13477 = vsel %vm26, %v13363, 0.0
  %v13478 = vadd.f32 %v13476, %v13477
  %v13479 = vsel %vm26, %v13364, 0.0
  %v13480 = vadd.f32 %v13478, %v13479
  %v13481 = vsel %vm26, %v13365, 0.0
  %v13482 = vadd.f32 %v13480, %v13481
  %v13483 = vsel %vm26, %v13366, 0.0
  %v13484 = vadd.f32 %v13482, %v13483
  %v13485 = vsel %vm26, %v13367, 0.0
  %v13486 = vadd.f32 %v13484, %v13485
  %v13487 = vsel %vm26, %v13368, 0.0
  %v13488 = vadd.f32 %v13486, %v13487
  %v13489 = vsel %vm26, %v13369, 0.0
  %v13490 = vadd.f32 %v13488, %v13489
  %v13491 = vsel %vm26, %v13370, 0.0
  %v13492 = vadd.f32 %v13490, %v13491
  %v13493 = vsel %vm26, %v13371, 0.0
  %v13494 = vadd.f32 %v13492, %v13493
  %v13495 = vsel %vm26, %v13372, 0.0
  %v13496 = vadd.f32 %v13494, %v13495
  %v13497 = vsel %vm26, %v13373, 0.0
  %v13498 = vadd.f32 %v13496, %v13497
  %v13499 = vsel %vm26, %v13374, 0.0
  %v13500 = vadd.f32 %v13498, %v13499
  %v13501 = vsel %vm26, %v13375, 0.0
  %v13502 = vadd.f32 %v13500, %v13501
  %v13503 = vrot.slane %v13502, 4
  %v13504 = vadd.f32 %v13502, %v13503
  %v13505 = vrot.slane %v13504, 2
  %v13506 = vadd.f32 %v13504, %v13505
  %v13507 = vrot.slane %v13506, 1
  %v13508 = vadd.f32 %v13506, %v13507
  %v13509 = vmul.f32 %v13508, 0.001953125
  %v13510 = vmul.f32 %v13312, %v13312
  %v13511 = vmul.f32 %v13313, %v13313
  %v13512 = vmul.f32 %v13314, %v13314
  %v13513 = vmul.f32 %v13315, %v13315
  %v13514 = vmul.f32 %v13316, %v13316
  %v13515 = vmul.f32 %v13317, %v13317
  %v13516 = vmul.f32 %v13318, %v13318
  %v13517 = vmul.f32 %v13319, %v13319
  %v13518 = vmul.f32 %v13320, %v13320
  %v13519 = vmul.f32 %v13321, %v13321
  %v13520 = vmul.f32 %v13322, %v13322
  %v13521 = vmul.f32 %v13323, %v13323
  %v13522 = vmul.f32 %v13324, %v13324
  %v13523 = vmul.f32 %v13325, %v13325
  %v13524 = vmul.f32 %v13326, %v13326
  %v13525 = vmul.f32 %v13327, %v13327
  %v13526 = vmul.f32 %v13328, %v13328
  %v13527 = vmul.f32 %v13329, %v13329
  %v13528 = vmul.f32 %v13330, %v13330
  %v13529 = vmul.f32 %v13331, %v13331
  %v13530 = vmul.f32 %v13332, %v13332
  %v13531 = vmul.f32 %v13333, %v13333
  %v13532 = vmul.f32 %v13334, %v13334
  %v13533 = vmul.f32 %v13335, %v13335
  %v13534 = vmul.f32 %v13336, %v13336
  %v13535 = vmul.f32 %v13337, %v13337
  %v13536 = vmul.f32 %v13338, %v13338
  %v13537 = vmul.f32 %v13339, %v13339
  %v13538 = vmul.f32 %v13340, %v13340
  %v13539 = vmul.f32 %v13341, %v13341
  %v13540 = vmul.f32 %v13342, %v13342
  %v13541 = vmul.f32 %v13343, %v13343
  %v13542 = vmul.f32 %v13344, %v13344
  %v13543 = vmul.f32 %v13345, %v13345
  %v13544 = vmul.f32 %v13346, %v13346
  %v13545 = vmul.f32 %v13347, %v13347
  %v13546 = vmul.f32 %v13348, %v13348
  %v13547 = vmul.f32 %v13349, %v13349
  %v13548 = vmul.f32 %v13350, %v13350
  %v13549 = vmul.f32 %v13351, %v13351
  %v13550 = vmul.f32 %v13352, %v13352
  %v13551 = vmul.f32 %v13353, %v13353
  %v13552 = vmul.f32 %v13354, %v13354
  %v13553 = vmul.f32 %v13355, %v13355
  %v13554 = vmul.f32 %v13356, %v13356
  %v13555 = vmul.f32 %v13357, %v13357
  %v13556 = vmul.f32 %v13358, %v13358
  %v13557 = vmul.f32 %v13359, %v13359
  %v13558 = vmul.f32 %v13360, %v13360
  %v13559 = vmul.f32 %v13361, %v13361
  %v13560 = vmul.f32 %v13362, %v13362
  %v13561 = vmul.f32 %v13363, %v13363
  %v13562 = vmul.f32 %v13364, %v13364
  %v13563 = vmul.f32 %v13365, %v13365
  %v13564 = vmul.f32 %v13366, %v13366
  %v13565 = vmul.f32 %v13367, %v13367
  %v13566 = vmul.f32 %v13368, %v13368
  %v13567 = vmul.f32 %v13369, %v13369
  %v13568 = vmul.f32 %v13370, %v13370
  %v13569 = vmul.f32 %v13371, %v13371
  %v13570 = vmul.f32 %v13372, %v13372
  %v13571 = vmul.f32 %v13373, %v13373
  %v13572 = vmul.f32 %v13374, %v13374
  %v13573 = vmul.f32 %v13375, %v13375
  %v13574 = vsel %vm26, %v13510, 0.0
  %v13575 = vsel %vm26, %v13511, 0.0
  %v13576 = vadd.f32 %v13574, %v13575
  %v13577 = vsel %vm26, %v13512, 0.0
  %v13578 = vadd.f32 %v13576, %v13577
  %v13579 = vsel %vm26, %v13513, 0.0
  %v13580 = vadd.f32 %v13578, %v13579
  %v13581 = vsel %vm26, %v13514, 0.0
  %v13582 = vadd.f32 %v13580, %v13581
  %v13583 = vsel %vm26, %v13515, 0.0
  %v13584 = vadd.f32 %v13582, %v13583
  %v13585 = vsel %vm26, %v13516, 0.0
  %v13586 = vadd.f32 %v13584, %v13585
  %v13587 = vsel %vm26, %v13517, 0.0
  %v13588 = vadd.f32 %v13586, %v13587
  %v13589 = vsel %vm26, %v13518, 0.0
  %v13590 = vadd.f32 %v13588, %v13589
  %v13591 = vsel %vm26, %v13519, 0.0
  %v13592 = vadd.f32 %v13590, %v13591
  %v13593 = vsel %vm26, %v13520, 0.0
  %v13594 = vadd.f32 %v13592, %v13593
  %v13595 = vsel %vm26, %v13521, 0.0
  %v13596 = vadd.f32 %v13594, %v13595
  %v13597 = vsel %vm26, %v13522, 0.0
  %v13598 = vadd.f32 %v13596, %v13597
  %v13599 = vsel %vm26, %v13523, 0.0
  %v13600 = vadd.f32 %v13598, %v13599
  %v13601 = vsel %vm26, %v13524, 0.0
  %v13602 = vadd.f32 %v13600, %v13601
  %v13603 = vsel %vm26, %v13525, 0.0
  %v13604 = vadd.f32 %v13602, %v13603
  %v13605 = vsel %vm26, %v13526, 0.0
  %v13606 = vadd.f32 %v13604, %v13605
  %v13607 = vsel %vm26, %v13527, 0.0
  %v13608 = vadd.f32 %v13606, %v13607
  %v13609 = vsel %vm26, %v13528, 0.0
  %v13610 = vadd.f32 %v13608, %v13609
  %v13611 = vsel %vm26, %v13529, 0.0
  %v13612 = vadd.f32 %v13610, %v13611
  %v13613 = vsel %vm26, %v13530, 0.0
  %v13614 = vadd.f32 %v13612, %v13613
  %v13615 = vsel %vm26, %v13531, 0.0
  %v13616 = vadd.f32 %v13614, %v13615
  %v13617 = vsel %vm26, %v13532, 0.0
  %v13618 = vadd.f32 %v13616, %v13617
  %v13619 = vsel %vm26, %v13533, 0.0
  %v13620 = vadd.f32 %v13618, %v13619
  %v13621 = vsel %vm26, %v13534, 0.0
  %v13622 = vadd.f32 %v13620, %v13621
  %v13623 = vsel %vm26, %v13535, 0.0
  %v13624 = vadd.f32 %v13622, %v13623
  %v13625 = vsel %vm26, %v13536, 0.0
  %v13626 = vadd.f32 %v13624, %v13625
  %v13627 = vsel %vm26, %v13537, 0.0
  %v13628 = vadd.f32 %v13626, %v13627
  %v13629 = vsel %vm26, %v13538, 0.0
  %v13630 = vadd.f32 %v13628, %v13629
  %v13631 = vsel %vm26, %v13539, 0.0
  %v13632 = vadd.f32 %v13630, %v13631
  %v13633 = vsel %vm26, %v13540, 0.0
  %v13634 = vadd.f32 %v13632, %v13633
  %v13635 = vsel %vm26, %v13541, 0.0
  %v13636 = vadd.f32 %v13634, %v13635
  %v13637 = vsel %vm26, %v13542, 0.0
  %v13638 = vadd.f32 %v13636, %v13637
  %v13639 = vsel %vm26, %v13543, 0.0
  %v13640 = vadd.f32 %v13638, %v13639
  %v13641 = vsel %vm26, %v13544, 0.0
  %v13642 = vadd.f32 %v13640, %v13641
  %v13643 = vsel %vm26, %v13545, 0.0
  %v13644 = vadd.f32 %v13642, %v13643
  %v13645 = vsel %vm26, %v13546, 0.0
  %v13646 = vadd.f32 %v13644, %v13645
  %v13647 = vsel %vm26, %v13547, 0.0
  %v13648 = vadd.f32 %v13646, %v13647
  %v13649 = vsel %vm26, %v13548, 0.0
  %v13650 = vadd.f32 %v13648, %v13649
  %v13651 = vsel %vm26, %v13549, 0.0
  %v13652 = vadd.f32 %v13650, %v13651
  %v13653 = vsel %vm26, %v13550, 0.0
  %v13654 = vadd.f32 %v13652, %v13653
  %v13655 = vsel %vm26, %v13551, 0.0
  %v13656 = vadd.f32 %v13654, %v13655
  %v13657 = vsel %vm26, %v13552, 0.0
  %v13658 = vadd.f32 %v13656, %v13657
  %v13659 = vsel %vm26, %v13553, 0.0
  %v13660 = vadd.f32 %v13658, %v13659
  %v13661 = vsel %vm26, %v13554, 0.0
  %v13662 = vadd.f32 %v13660, %v13661
  %v13663 = vsel %vm26, %v13555, 0.0
  %v13664 = vadd.f32 %v13662, %v13663
  %v13665 = vsel %vm26, %v13556, 0.0
  %v13666 = vadd.f32 %v13664, %v13665
  %v13667 = vsel %vm26, %v13557, 0.0
  %v13668 = vadd.f32 %v13666, %v13667
  %v13669 = vsel %vm26, %v13558, 0.0
  %v13670 = vadd.f32 %v13668, %v13669
  %v13671 = vsel %vm26, %v13559, 0.0
  %v13672 = vadd.f32 %v13670, %v13671
  %v13673 = vsel %vm26, %v13560, 0.0
  %v13674 = vadd.f32 %v13672, %v13673
  %v13675 = vsel %vm26, %v13561, 0.0
  %v13676 = vadd.f32 %v13674, %v13675
  %v13677 = vsel %vm26, %v13562, 0.0
  %v13678 = vadd.f32 %v13676, %v13677
  %v13679 = vsel %vm26, %v13563, 0.0
  %v13680 = vadd.f32 %v13678, %v13679
  %v13681 = vsel %vm26, %v13564, 0.0
  %v13682 = vadd.f32 %v13680, %v13681
  %v13683 = vsel %vm26, %v13565, 0.0
  %v13684 = vadd.f32 %v13682, %v13683
  %v13685 = vsel %vm26, %v13566, 0.0
  %v13686 = vadd.f32 %v13684, %v13685
  %v13687 = vsel %vm26, %v13567, 0.0
  %v13688 = vadd.f32 %v13686, %v13687
  %v13689 = vsel %vm26, %v13568, 0.0
  %v13690 = vadd.f32 %v13688, %v13689
  %v13691 = vsel %vm26, %v13569, 0.0
  %v13692 = vadd.f32 %v13690, %v13691
  %v13693 = vsel %vm26, %v13570, 0.0
  %v13694 = vadd.f32 %v13692, %v13693
  %v13695 = vsel %vm26, %v13571, 0.0
  %v13696 = vadd.f32 %v13694, %v13695
  %v13697 = vsel %vm26, %v13572, 0.0
  %v13698 = vadd.f32 %v13696, %v13697
  %v13699 = vsel %vm26, %v13573, 0.0
  %v13700 = vadd.f32 %v13698, %v13699
  %v13701 = vrot.slane %v13700, 4
  %v13702 = vadd.f32 %v13700, %v13701
  %v13703 = vrot.slane %v13702, 2
  %v13704 = vadd.f32 %v13702, %v13703
  %v13705 = vrot.slane %v13704, 1
  %v13706 = vadd.f32 %v13704, %v13705
  %v13707 = vmul.f32 %v13706, 0.001953125
  %v13708 = vmul.f32 %v13509, %v13509
  %v13709 = vsub.f32 %v13707, %v13708
  %v13710 = vld [vmem:[%s5] sm:$0x1]
  %v13711 = vadd.f32 %v13709, 1e-05
  %v13712 = vrsqrt.pop %v13711
  %v13713 = vmul.f32 %v13710, %v13712
  %v13714 = vld [vmem:[%s6] sm:$0x1]
  %v13715 = vmul.f32 %v13509, %v13713
  %v13716 = vsub.f32 %v13714, %v13715
  %v13718 = vlaneseq
  %v13719 = vshrl.u32 %v13718, 7
  %v13720 = vsub.s32 0, %v13719
  %v13721 = vrot.slane %v13713, %v13720
  %v13723 = vmul.f32 %v13312, %v13721
  %v13724 = vmul.f32 %v13313, %v13721
  %v13725 = vmul.f32 %v13314, %v13721
  %v13726 = vmul.f32 %v13315, %v13721
  %v13727 = vmul.f32 %v13316, %v13721
  %v13728 = vmul.f32 %v13317, %v13721
  %v13729 = vmul.f32 %v13318, %v13721
  %v13730 = vmul.f32 %v13319, %v13721
  %v13731 = vmul.f32 %v13320, %v13721
  %v13732 = vmul.f32 %v13321, %v13721
  %v13733 = vmul.f32 %v13322, %v13721
  %v13734 = vmul.f32 %v13323, %v13721
  %v13735 = vmul.f32 %v13324, %v13721
  %v13736 = vmul.f32 %v13325, %v13721
  %v13737 = vmul.f32 %v13326, %v13721
  %v13738 = vmul.f32 %v13327, %v13721
  %v13739 = vmul.f32 %v13328, %v13721
  %v13740 = vmul.f32 %v13329, %v13721
  %v13741 = vmul.f32 %v13330, %v13721
  %v13742 = vmul.f32 %v13331, %v13721
  %v13743 = vmul.f32 %v13332, %v13721
  %v13744 = vmul.f32 %v13333, %v13721
  %v13745 = vmul.f32 %v13334, %v13721
  %v13746 = vmul.f32 %v13335, %v13721
  %v13747 = vmul.f32 %v13336, %v13721
  %v13748 = vmul.f32 %v13337, %v13721
  %v13749 = vmul.f32 %v13338, %v13721
  %v13750 = vmul.f32 %v13339, %v13721
  %v13751 = vmul.f32 %v13340, %v13721
  %v13752 = vmul.f32 %v13341, %v13721
  %v13753 = vmul.f32 %v13342, %v13721
  %v13754 = vmul.f32 %v13343, %v13721
  %v13755 = vmul.f32 %v13344, %v13721
  %v13756 = vmul.f32 %v13345, %v13721
  %v13757 = vmul.f32 %v13346, %v13721
  %v13758 = vmul.f32 %v13347, %v13721
  %v13759 = vmul.f32 %v13348, %v13721
  %v13760 = vmul.f32 %v13349, %v13721
  %v13761 = vmul.f32 %v13350, %v13721
  %v13762 = vmul.f32 %v13351, %v13721
  %v13763 = vmul.f32 %v13352, %v13721
  %v13764 = vmul.f32 %v13353, %v13721
  %v13765 = vmul.f32 %v13354, %v13721
  %v13766 = vmul.f32 %v13355, %v13721
  %v13767 = vmul.f32 %v13356, %v13721
  %v13768 = vmul.f32 %v13357, %v13721
  %v13769 = vmul.f32 %v13358, %v13721
  %v13770 = vmul.f32 %v13359, %v13721
  %v13771 = vmul.f32 %v13360, %v13721
  %v13772 = vmul.f32 %v13361, %v13721
  %v13773 = vmul.f32 %v13362, %v13721
  %v13774 = vmul.f32 %v13363, %v13721
  %v13775 = vmul.f32 %v13364, %v13721
  %v13776 = vmul.f32 %v13365, %v13721
  %v13777 = vmul.f32 %v13366, %v13721
  %v13778 = vmul.f32 %v13367, %v13721
  %v13779 = vmul.f32 %v13368, %v13721
  %v13780 = vmul.f32 %v13369, %v13721
  %v13781 = vmul.f32 %v13370, %v13721
  %v13782 = vmul.f32 %v13371, %v13721
  %v13783 = vmul.f32 %v13372, %v13721
  %v13784 = vmul.f32 %v13373, %v13721
  %v13785 = vmul.f32 %v13374, %v13721
  %v13786 = vmul.f32 %v13375, %v13721
  %v13788 = vlaneseq
  %v13789 = vshrl.u32 %v13788, 7
  %v13790 = vsub.s32 0, %v13789
  %v13791 = vrot.slane %v13716, %v13790
  %v13793 = vadd.f32 %v13723, %v13791
  %v13794 = vadd.f32 %v13724, %v13791
  %v13795 = vadd.f32 %v13725, %v13791
  %v13796 = vadd.f32 %v13726, %v13791
  %v13797 = vadd.f32 %v13727, %v13791
  %v13798 = vadd.f32 %v13728, %v13791
  %v13799 = vadd.f32 %v13729, %v13791
  %v13800 = vadd.f32 %v13730, %v13791
  %v13801 = vadd.f32 %v13731, %v13791
  %v13802 = vadd.f32 %v13732, %v13791
  %v13803 = vadd.f32 %v13733, %v13791
  %v13804 = vadd.f32 %v13734, %v13791
  %v13805 = vadd.f32 %v13735, %v13791
  %v13806 = vadd.f32 %v13736, %v13791
  %v13807 = vadd.f32 %v13737, %v13791
  %v13808 = vadd.f32 %v13738, %v13791
  %v13809 = vadd.f32 %v13739, %v13791
  %v13810 = vadd.f32 %v13740, %v13791
  %v13811 = vadd.f32 %v13741, %v13791
  %v13812 = vadd.f32 %v13742, %v13791
  %v13813 = vadd.f32 %v13743, %v13791
  %v13814 = vadd.f32 %v13744, %v13791
  %v13815 = vadd.f32 %v13745, %v13791
  %v13816 = vadd.f32 %v13746, %v13791
  %v13817 = vadd.f32 %v13747, %v13791
  %v13818 = vadd.f32 %v13748, %v13791
  %v13819 = vadd.f32 %v13749, %v13791
  %v13820 = vadd.f32 %v13750, %v13791
  %v13821 = vadd.f32 %v13751, %v13791
  %v13822 = vadd.f32 %v13752, %v13791
  %v13823 = vadd.f32 %v13753, %v13791
  %v13824 = vadd.f32 %v13754, %v13791
  %v13825 = vadd.f32 %v13755, %v13791
  %v13826 = vadd.f32 %v13756, %v13791
  %v13827 = vadd.f32 %v13757, %v13791
  %v13828 = vadd.f32 %v13758, %v13791
  %v13829 = vadd.f32 %v13759, %v13791
  %v13830 = vadd.f32 %v13760, %v13791
  %v13831 = vadd.f32 %v13761, %v13791
  %v13832 = vadd.f32 %v13762, %v13791
  %v13833 = vadd.f32 %v13763, %v13791
  %v13834 = vadd.f32 %v13764, %v13791
  %v13835 = vadd.f32 %v13765, %v13791
  %v13836 = vadd.f32 %v13766, %v13791
  %v13837 = vadd.f32 %v13767, %v13791
  %v13838 = vadd.f32 %v13768, %v13791
  %v13839 = vadd.f32 %v13769, %v13791
  %v13840 = vadd.f32 %v13770, %v13791
  %v13841 = vadd.f32 %v13771, %v13791
  %v13842 = vadd.f32 %v13772, %v13791
  %v13843 = vadd.f32 %v13773, %v13791
  %v13844 = vadd.f32 %v13774, %v13791
  %v13845 = vadd.f32 %v13775, %v13791
  %v13846 = vadd.f32 %v13776, %v13791
  %v13847 = vadd.f32 %v13777, %v13791
  %v13848 = vadd.f32 %v13778, %v13791
  %v13849 = vadd.f32 %v13779, %v13791
  %v13850 = vadd.f32 %v13780, %v13791
  %v13851 = vadd.f32 %v13781, %v13791
  %v13852 = vadd.f32 %v13782, %v13791
  %v13853 = vadd.f32 %v13783, %v13791
  %v13854 = vadd.f32 %v13784, %v13791
  %v13855 = vadd.f32 %v13785, %v13791
  %v13856 = vadd.f32 %v13786, %v13791
  %v13857 = vld [vmem:[%s0] sm:$0xff]
  %v13858 = vld [vmem:[%s0 + $0x8] sm:$0xff]
  %v13859 = vld [vmem:[%s0 + $0x10] sm:$0xff]
  %v13860 = vld [vmem:[%s0 + $0x18] sm:$0xff]
  %v13861 = vld [vmem:[%s0 + $0x20] sm:$0xff]
  %v13862 = vld [vmem:[%s0 + $0x28] sm:$0xff]
  %v13863 = vld [vmem:[%s0 + $0x30] sm:$0xff]
  %v13864 = vld [vmem:[%s0 + $0x38] sm:$0xff]
  %v13865 = vld [vmem:[%s0 + $0x40] sm:$0xff]
  %v13866 = vld [vmem:[%s0 + $0x48] sm:$0xff]
  %v13867 = vld [vmem:[%s0 + $0x50] sm:$0xff]
  %v13868 = vld [vmem:[%s0 + $0x58] sm:$0xff]
  %v13869 = vld [vmem:[%s0 + $0x60] sm:$0xff]
  %v13870 = vld [vmem:[%s0 + $0x68] sm:$0xff]
  %v13871 = vld [vmem:[%s0 + $0x70] sm:$0xff]
  %v13872 = vld [vmem:[%s0 + $0x78] sm:$0xff]
  %v13873 = vld [vmem:[%s0 + $0x80] sm:$0xff]
  %v13874 = vld [vmem:[%s0 + $0x88] sm:$0xff]
  %v13875 = vld [vmem:[%s0 + $0x90] sm:$0xff]
  %v13876 = vld [vmem:[%s0 + $0x98] sm:$0xff]
  %v13877 = vld [vmem:[%s0 + $0xa0] sm:$0xff]
  %v13878 = vld [vmem:[%s0 + $0xa8] sm:$0xff]
  %v13879 = vld [vmem:[%s0 + $0xb0] sm:$0xff]
  %v13880 = vld [vmem:[%s0 + $0xb8] sm:$0xff]
  %v13881 = vld [vmem:[%s0 + $0xc0] sm:$0xff]
  %v13882 = vld [vmem:[%s0 + $0xc8] sm:$0xff]
  %v13883 = vld [vmem:[%s0 + $0xd0] sm:$0xff]
  %v13884 = vld [vmem:[%s0 + $0xd8] sm:$0xff]
  %v13885 = vld [vmem:[%s0 + $0xe0] sm:$0xff]
  %v13886 = vld [vmem:[%s0 + $0xe8] sm:$0xff]
  %v13887 = vld [vmem:[%s0 + $0xf0] sm:$0xff]
  %v13888 = vld [vmem:[%s0 + $0xf8] sm:$0xff]
  %v13889 = vld [vmem:[%s0 + $0x100] sm:$0xff]
  %v13890 = vld [vmem:[%s0 + $0x108] sm:$0xff]
  %v13891 = vld [vmem:[%s0 + $0x110] sm:$0xff]
  %v13892 = vld [vmem:[%s0 + $0x118] sm:$0xff]
  %v13893 = vld [vmem:[%s0 + $0x120] sm:$0xff]
  %v13894 = vld [vmem:[%s0 + $0x128] sm:$0xff]
  %v13895 = vld [vmem:[%s0 + $0x130] sm:$0xff]
  %v13896 = vld [vmem:[%s0 + $0x138] sm:$0xff]
  %v13897 = vld [vmem:[%s0 + $0x140] sm:$0xff]
  %v13898 = vld [vmem:[%s0 + $0x148] sm:$0xff]
  %v13899 = vld [vmem:[%s0 + $0x150] sm:$0xff]
  %v13900 = vld [vmem:[%s0 + $0x158] sm:$0xff]
  %v13901 = vld [vmem:[%s0 + $0x160] sm:$0xff]
  %v13902 = vld [vmem:[%s0 + $0x168] sm:$0xff]
  %v13903 = vld [vmem:[%s0 + $0x170] sm:$0xff]
  %v13904 = vld [vmem:[%s0 + $0x178] sm:$0xff]
  %v13905 = vld [vmem:[%s0 + $0x180] sm:$0xff]
  %v13906 = vld [vmem:[%s0 + $0x188] sm:$0xff]
  %v13907 = vld [vmem:[%s0 + $0x190] sm:$0xff]
  %v13908 = vld [vmem:[%s0 + $0x198] sm:$0xff]
  %v13909 = vld [vmem:[%s0 + $0x1a0] sm:$0xff]
  %v13910 = vld [vmem:[%s0 + $0x1a8] sm:$0xff]
  %v13911 = vld [vmem:[%s0 + $0x1b0] sm:$0xff]
  %v13912 = vld [vmem:[%s0 + $0x1b8] sm:$0xff]
  %v13913 = vld [vmem:[%s0 + $0x1c0] sm:$0xff]
  %v13914 = vld [vmem:[%s0 + $0x1c8] sm:$0xff]
  %v13915 = vld [vmem:[%s0 + $0x1d0] sm:$0xff]
  %v13916 = vld [vmem:[%s0 + $0x1d8] sm:$0xff]
  %v13917 = vld [vmem:[%s0 + $0x1e0] sm:$0xff]
  %v13918 = vld [vmem:[%s0 + $0x1e8] sm:$0xff]
  %v13919 = vld [vmem:[%s0 + $0x1f0] sm:$0xff]
  %v13920 = vld [vmem:[%s0 + $0x1f8] sm:$0xff]
  %v13921 = vadd.f32 %v13793, %v13857
  %v13922 = vadd.f32 %v13794, %v13858
  %v13923 = vadd.f32 %v13795, %v13859
  %v13924 = vadd.f32 %v13796, %v13860
  %v13925 = vadd.f32 %v13797, %v13861
  %v13926 = vadd.f32 %v13798, %v13862
  %v13927 = vadd.f32 %v13799, %v13863
  %v13928 = vadd.f32 %v13800, %v13864
  %v13929 = vadd.f32 %v13801, %v13865
  %v13930 = vadd.f32 %v13802, %v13866
  %v13931 = vadd.f32 %v13803, %v13867
  %v13932 = vadd.f32 %v13804, %v13868
  %v13933 = vadd.f32 %v13805, %v13869
  %v13934 = vadd.f32 %v13806, %v13870
  %v13935 = vadd.f32 %v13807, %v13871
  %v13936 = vadd.f32 %v13808, %v13872
  %v13937 = vadd.f32 %v13809, %v13873
  %v13938 = vadd.f32 %v13810, %v13874
  %v13939 = vadd.f32 %v13811, %v13875
  %v13940 = vadd.f32 %v13812, %v13876
  %v13941 = vadd.f32 %v13813, %v13877
  %v13942 = vadd.f32 %v13814, %v13878
  %v13943 = vadd.f32 %v13815, %v13879
  %v13944 = vadd.f32 %v13816, %v13880
  %v13945 = vadd.f32 %v13817, %v13881
  %v13946 = vadd.f32 %v13818, %v13882
  %v13947 = vadd.f32 %v13819, %v13883
  %v13948 = vadd.f32 %v13820, %v13884
  %v13949 = vadd.f32 %v13821, %v13885
  %v13950 = vadd.f32 %v13822, %v13886
  %v13951 = vadd.f32 %v13823, %v13887
  %v13952 = vadd.f32 %v13824, %v13888
  %v13953 = vadd.f32 %v13825, %v13889
  %v13954 = vadd.f32 %v13826, %v13890
  %v13955 = vadd.f32 %v13827, %v13891
  %v13956 = vadd.f32 %v13828, %v13892
  %v13957 = vadd.f32 %v13829, %v13893
  %v13958 = vadd.f32 %v13830, %v13894
  %v13959 = vadd.f32 %v13831, %v13895
  %v13960 = vadd.f32 %v13832, %v13896
  %v13961 = vadd.f32 %v13833, %v13897
  %v13962 = vadd.f32 %v13834, %v13898
  %v13963 = vadd.f32 %v13835, %v13899
  %v13964 = vadd.f32 %v13836, %v13900
  %v13965 = vadd.f32 %v13837, %v13901
  %v13966 = vadd.f32 %v13838, %v13902
  %v13967 = vadd.f32 %v13839, %v13903
  %v13968 = vadd.f32 %v13840, %v13904
  %v13969 = vadd.f32 %v13841, %v13905
  %v13970 = vadd.f32 %v13842, %v13906
  %v13971 = vadd.f32 %v13843, %v13907
  %v13972 = vadd.f32 %v13844, %v13908
  %v13973 = vadd.f32 %v13845, %v13909
  %v13974 = vadd.f32 %v13846, %v13910
  %v13975 = vadd.f32 %v13847, %v13911
  %v13976 = vadd.f32 %v13848, %v13912
  %v13977 = vadd.f32 %v13849, %v13913
  %v13978 = vadd.f32 %v13850, %v13914
  %v13979 = vadd.f32 %v13851, %v13915
  %v13980 = vadd.f32 %v13852, %v13916
  %v13981 = vadd.f32 %v13853, %v13917
  %v13982 = vadd.f32 %v13854, %v13918
  %v13983 = vadd.f32 %v13855, %v13919
  %v13984 = vadd.f32 %v13856, %v13920
  %v13985 = vmax.f32 %v13921, 0.0
  %v13986 = vmax.f32 %v13922, 0.0
  %v13987 = vmax.f32 %v13923, 0.0
  %v13988 = vmax.f32 %v13924, 0.0
  %v13989 = vmax.f32 %v13925, 0.0
  %v13990 = vmax.f32 %v13926, 0.0
  %v13991 = vmax.f32 %v13927, 0.0
  %v13992 = vmax.f32 %v13928, 0.0
  %v13993 = vmax.f32 %v13929, 0.0
  %v13994 = vmax.f32 %v13930, 0.0
  %v13995 = vmax.f32 %v13931, 0.0
  %v13996 = vmax.f32 %v13932, 0.0
  %v13997 = vmax.f32 %v13933, 0.0
  %v13998 = vmax.f32 %v13934, 0.0
  %v13999 = vmax.f32 %v13935, 0.0
  %v14000 = vmax.f32 %v13936, 0.0
  %v14001 = vmax.f32 %v13937, 0.0
  %v14002 = vmax.f32 %v13938, 0.0
  %v14003 = vmax.f32 %v13939, 0.0
  %v14004 = vmax.f32 %v13940, 0.0
  %v14005 = vmax.f32 %v13941, 0.0
  %v14006 = vmax.f32 %v13942, 0.0
  %v14007 = vmax.f32 %v13943, 0.0
  %v14008 = vmax.f32 %v13944, 0.0
  %v14009 = vmax.f32 %v13945, 0.0
  %v14010 = vmax.f32 %v13946, 0.0
  %v14011 = vmax.f32 %v13947, 0.0
  %v14012 = vmax.f32 %v13948, 0.0
  %v14013 = vmax.f32 %v13949, 0.0
  %v14014 = vmax.f32 %v13950, 0.0
  %v14015 = vmax.f32 %v13951, 0.0
  %v14016 = vmax.f32 %v13952, 0.0
  %v14017 = vmax.f32 %v13953, 0.0
  %v14018 = vmax.f32 %v13954, 0.0
  %v14019 = vmax.f32 %v13955, 0.0
  %v14020 = vmax.f32 %v13956, 0.0
  %v14021 = vmax.f32 %v13957, 0.0
  %v14022 = vmax.f32 %v13958, 0.0
  %v14023 = vmax.f32 %v13959, 0.0
  %v14024 = vmax.f32 %v13960, 0.0
  %v14025 = vmax.f32 %v13961, 0.0
  %v14026 = vmax.f32 %v13962, 0.0
  %v14027 = vmax.f32 %v13963, 0.0
  %v14028 = vmax.f32 %v13964, 0.0
  %v14029 = vmax.f32 %v13965, 0.0
  %v14030 = vmax.f32 %v13966, 0.0
  %v14031 = vmax.f32 %v13967, 0.0
  %v14032 = vmax.f32 %v13968, 0.0
  %v14033 = vmax.f32 %v13969, 0.0
  %v14034 = vmax.f32 %v13970, 0.0
  %v14035 = vmax.f32 %v13971, 0.0
  %v14036 = vmax.f32 %v13972, 0.0
  %v14037 = vmax.f32 %v13973, 0.0
  %v14038 = vmax.f32 %v13974, 0.0
  %v14039 = vmax.f32 %v13975, 0.0
  %v14040 = vmax.f32 %v13976, 0.0
  %v14041 = vmax.f32 %v13977, 0.0
  %v14042 = vmax.f32 %v13978, 0.0
  %v14043 = vmax.f32 %v13979, 0.0
  %v14044 = vmax.f32 %v13980, 0.0
  %v14045 = vmax.f32 %v13981, 0.0
  %v14046 = vmax.f32 %v13982, 0.0
  %v14047 = vmax.f32 %v13983, 0.0
  %v14048 = vmax.f32 %v13984, 0.0
  %14049 = vst.msk [vmem:[%s7] sm:$0xff] %vm26, %v13985
  %14050 = vst.msk [vmem:[%s7 + $0x8] sm:$0xff] %vm26, %v13986
  %14051 = vst.msk [vmem:[%s7 + $0x10] sm:$0xff] %vm26, %v13987
  %14052 = vst.msk [vmem:[%s7 + $0x18] sm:$0xff] %vm26, %v13988
  %14053 = vst.msk [vmem:[%s7 + $0x20] sm:$0xff] %vm26, %v13989
  %14054 = vst.msk [vmem:[%s7 + $0x28] sm:$0xff] %vm26, %v13990
  %14055 = vst.msk [vmem:[%s7 + $0x30] sm:$0xff] %vm26, %v13991
  %14056 = vst.msk [vmem:[%s7 + $0x38] sm:$0xff] %vm26, %v13992
  %14057 = vst.msk [vmem:[%s7 + $0x40] sm:$0xff] %vm26, %v13993
  %14058 = vst.msk [vmem:[%s7 + $0x48] sm:$0xff] %vm26, %v13994
  %14059 = vst.msk [vmem:[%s7 + $0x50] sm:$0xff] %vm26, %v13995
  %14060 = vst.msk [vmem:[%s7 + $0x58] sm:$0xff] %vm26, %v13996
  %14061 = vst.msk [vmem:[%s7 + $0x60] sm:$0xff] %vm26, %v13997
  %14062 = vst.msk [vmem:[%s7 + $0x68] sm:$0xff] %vm26, %v13998
  %14063 = vst.msk [vmem:[%s7 + $0x70] sm:$0xff] %vm26, %v13999
  %14064 = vst.msk [vmem:[%s7 + $0x78] sm:$0xff] %vm26, %v14000
  %14065 = vst.msk [vmem:[%s7 + $0x80] sm:$0xff] %vm26, %v14001
  %14066 = vst.msk [vmem:[%s7 + $0x88] sm:$0xff] %vm26, %v14002
  %14067 = vst.msk [vmem:[%s7 + $0x90] sm:$0xff] %vm26, %v14003
  %14068 = vst.msk [vmem:[%s7 + $0x98] sm:$0xff] %vm26, %v14004
  %14069 = vst.msk [vmem:[%s7 + $0xa0] sm:$0xff] %vm26, %v14005
  %14070 = vst.msk [vmem:[%s7 + $0xa8] sm:$0xff] %vm26, %v14006
  %14071 = vst.msk [vmem:[%s7 + $0xb0] sm:$0xff] %vm26, %v14007
  %14072 = vst.msk [vmem:[%s7 + $0xb8] sm:$0xff] %vm26, %v14008
  %14073 = vst.msk [vmem:[%s7 + $0xc0] sm:$0xff] %vm26, %v14009
  %14074 = vst.msk [vmem:[%s7 + $0xc8] sm:$0xff] %vm26, %v14010
  %14075 = vst.msk [vmem:[%s7 + $0xd0] sm:$0xff] %vm26, %v14011
  %14076 = vst.msk [vmem:[%s7 + $0xd8] sm:$0xff] %vm26, %v14012
  %14077 = vst.msk [vmem:[%s7 + $0xe0] sm:$0xff] %vm26, %v14013
  %14078 = vst.msk [vmem:[%s7 + $0xe8] sm:$0xff] %vm26, %v14014
  %14079 = vst.msk [vmem:[%s7 + $0xf0] sm:$0xff] %vm26, %v14015
  %14080 = vst.msk [vmem:[%s7 + $0xf8] sm:$0xff] %vm26, %v14016
  %14081 = vst.msk [vmem:[%s7 + $0x100] sm:$0xff] %vm26, %v14017
  %14082 = vst.msk [vmem:[%s7 + $0x108] sm:$0xff] %vm26, %v14018
  %14083 = vst.msk [vmem:[%s7 + $0x110] sm:$0xff] %vm26, %v14019
  %14084 = vst.msk [vmem:[%s7 + $0x118] sm:$0xff] %vm26, %v14020
  %14085 = vst.msk [vmem:[%s7 + $0x120] sm:$0xff] %vm26, %v14021
  %14086 = vst.msk [vmem:[%s7 + $0x128] sm:$0xff] %vm26, %v14022
  %14087 = vst.msk [vmem:[%s7 + $0x130] sm:$0xff] %vm26, %v14023
  %14088 = vst.msk [vmem:[%s7 + $0x138] sm:$0xff] %vm26, %v14024
  %14089 = vst.msk [vmem:[%s7 + $0x140] sm:$0xff] %vm26, %v14025
  %14090 = vst.msk [vmem:[%s7 + $0x148] sm:$0xff] %vm26, %v14026
  %14091 = vst.msk [vmem:[%s7 + $0x150] sm:$0xff] %vm26, %v14027
  %14092 = vst.msk [vmem:[%s7 + $0x158] sm:$0xff] %vm26, %v14028
  %14093 = vst.msk [vmem:[%s7 + $0x160] sm:$0xff] %vm26, %v14029
  %14094 = vst.msk [vmem:[%s7 + $0x168] sm:$0xff] %vm26, %v14030
  %14095 = vst.msk [vmem:[%s7 + $0x170] sm:$0xff] %vm26, %v14031
  %14096 = vst.msk [vmem:[%s7 + $0x178] sm:$0xff] %vm26, %v14032
  %14097 = vst.msk [vmem:[%s7 + $0x180] sm:$0xff] %vm26, %v14033
  %14098 = vst.msk [vmem:[%s7 + $0x188] sm:$0xff] %vm26, %v14034
  %14099 = vst.msk [vmem:[%s7 + $0x190] sm:$0xff] %vm26, %v14035
  %14100 = vst.msk [vmem:[%s7 + $0x198] sm:$0xff] %vm26, %v14036
  %14101 = vst.msk [vmem:[%s7 + $0x1a0] sm:$0xff] %vm26, %v14037
  %14102 = vst.msk [vmem:[%s7 + $0x1a8] sm:$0xff] %vm26, %v14038
  %14103 = vst.msk [vmem:[%s7 + $0x1b0] sm:$0xff] %vm26, %v14039
  %14104 = vst.msk [vmem:[%s7 + $0x1b8] sm:$0xff] %vm26, %v14040
  %14105 = vst.msk [vmem:[%s7 + $0x1c0] sm:$0xff] %vm26, %v14041
  %14106 = vst.msk [vmem:[%s7 + $0x1c8] sm:$0xff] %vm26, %v14042
  %14107 = vst.msk [vmem:[%s7 + $0x1d0] sm:$0xff] %vm26, %v14043
  %14108 = vst.msk [vmem:[%s7 + $0x1d8] sm:$0xff] %vm26, %v14044
  %14109 = vst.msk [vmem:[%s7 + $0x1e0] sm:$0xff] %vm26, %v14045
  %14110 = vst.msk [vmem:[%s7 + $0x1e8] sm:$0xff] %vm26, %v14046
  %14111 = vst.msk [vmem:[%s7 + $0x1f0] sm:$0xff] %vm26, %v14047
  %14112 = vst.msk [vmem:[%s7 + $0x1f8] sm:$0xff] %vm26, %v14048
  // Predicated region
  $region30: #{tpu_custom_call.1} parent=0 // pred_check
    _
  $region31: #{tpu_custom_call.1} parent=0 // pred_check_branch
    %14114 = sbr.rel (0) target = $region33
  $region32: #{tpu_custom_call.1} parent=0 // pred_region
    _
  $region33: #{tpu_custom_call.1} parent=0 // pred_fallthru
    _
  // Predicated region
  $region34: #{tpu_custom_call.1} parent=0 // pred_check
    _
  $region35: #{tpu_custom_call.1} parent=0 // pred_check_branch
    %14116 = sbr.rel (0) target = $region37
  $region36: #{tpu_custom_call.1} parent=0 // pred_region
    _
  $region37: #{tpu_custom_call.1} parent=0 // pred_fallthru
    _

</llo_original>
